<compile_context>
chip_gen: v7x
topology: tpu7x:2x2x1
jax: 0.10.0
libtpu: 0.0.40
codegen_flags: <defaults>
</compile_context>

<pallas_src>
import numpy as np
import jax
import jax.numpy as jnp
from jax import lax
from jax.experimental import pallas as pl
from jax.experimental.pallas import tpu as pltpu


# ----------------------------------------------------------------------------
# Glue: conv1 im2col patches, grouped by (pool1 window position, conv2 parity
# plane).  Tiny (input is 6 KB/image) -- conv2's 9x expansion is done in-kernel.
# ----------------------------------------------------------------------------
def _conv1_pool_patches(x_img):
    """x_img: [N, 28, 28] f32.

    Returns
      p1:   [4, 4*N*64, 9]  conv1 patches.  Row R = ((pq*N + n)*8 + u)*8 + v
            addresses position (u, v) of parity plane pq=(p,q) of image n of the
            zero-padded 16x16 conv2 input (pad2[n, 2u+p, 2v+q, :]).
      mask: [4*N*64, 1]     1.0 where that position is interior, 0.0 where it is
            conv2 zero padding.
    """
    N = x_img.shape[0]
    xpad = jnp.pad(x_img, ((0, 0), (1, 1), (1, 1)))          # [N, 30, 30]

    pos = np.arange(4)                                        # pool1 window pos (i, j)
    pi = (pos // 2)[:, None, None, None, None, None]
    pj = (pos % 2)[:, None, None, None, None, None]
    pq = np.arange(4)                                         # parity plane (p, q)
    pp = (pq // 2)[None, :, None, None, None, None]
    qq = (pq % 2)[None, :, None, None, None, None]
    uu = np.arange(8)[None, None, :, None, None, None]
    vv = np.arange(8)[None, None, None, :, None, None]
    th = np.arange(3)[None, None, None, None, :, None]
    tw = np.arange(3)[None, None, None, None, None, :]

    hp = 2 * uu + pp                                          # padded conv2-input coords
    wp = 2 * vv + qq
    interior = (hp >= 1) & (hp <= 14) & (wp >= 1) & (wp <= 14)   # [1,4,8,8,1,1]

    # conv1-input (30x30 padded) coordinates of every patch element.
    src_h = np.clip(2 * (hp - 1) + pi + th, 0, 29)
    src_w = np.clip(2 * (wp - 1) + pj + tw, 0, 29)
    full = (4, 4, 8, 8, 3, 3)
    src_h = np.broadcast_to(src_h, full).astype(np.int32)
    src_w = np.broadcast_to(src_w, full).astype(np.int32)

    patches = xpad[:, src_h, src_w]                           # [N, 4, 4, 8, 8, 3, 3]
    patches = jnp.transpose(patches, (1, 2, 0, 3, 4, 5, 6))   # [pos, pq, N, u, v, th, tw]
    p1 = patches.reshape(4, 4 * N * 64, 9)

    valid = np.broadcast_to(interior[0, :, :, :, 0, 0][:, None, :, :], (4, N, 8, 8))
    mask = jnp.asarray(valid.reshape(4 * N * 64, 1).astype(np.float32))
    return p1, mask


# ----------------------------------------------------------------------------
# Kernel A: conv1 + bias + ReLU + pool1 + conv2 + bias + ReLU + pool2, in VMEM.
# ----------------------------------------------------------------------------
def _conv_stage_kernel(p1_ref, m1_ref, w1_ref, b1_ref, w2_ref, b2_ref,
                       out_ref, d_ref):
    N = out_ref.shape[0]
    R = p1_ref.shape[1]              # 4*N*64 parity-plane positions
    L8 = (8 * N - 1) * 8             # rows of the conv2/pool2 accumulator

    # conv1 + bias + ReLU; 2x2 max-pool fused as an elementwise max over the
    # four window positions (one small [R,9]x[9,32] matmul each).
    w1 = w1_ref[...]
    b1 = b1_ref[...]
    pooled1 = None
    for pos in range(4):
        y = jnp.dot(p1_ref[pos], w1, preferred_element_type=jnp.float32) + b1
        y = jnp.maximum(y, 0.0)
        pooled1 = y if pooled1 is None else jnp.maximum(pooled1, y)
    pooled1 = pooled1 * m1_ref[...]          # zeroed rows == conv2 zero padding

    # Parity-split padded conv2 input, flattened to [rows, 32], VMEM resident.
    d_ref[...] = jnp.zeros_like(d_ref)
    d_ref[0:R, :] = pooled1

    # conv2 + bias + ReLU + 2x2 max-pool: in-kernel im2col.  For each of the 4
    # pool-window positions, each of the 9 taps is one contiguous slice of the
    # parity planes and one [L8,32]x[32,32] matmul accumulated in f32.
    b2 = b2_ref[...]
    pool2 = None
    for i in range(2):
        for j in range(2):
            acc = jnp.zeros((L8, 32), jnp.float32)
            for th in range(3):
                for tw in range(3):
                    a = i + th
                    b = j + tw
                    start = ((a % 2) * 2 + (b % 2)) * (64 * N) + (a // 2) * 8 + (b // 2)
                    lhs = d_ref[start:start + L8, :]
                    acc = acc + jnp.dot(lhs, w2_ref[th * 3 + tw],
                                        preferred_element_type=jnp.float32)
            y = jnp.maximum(acc + b2, 0.0)
            pool2 = y if pool2 is None else jnp.maximum(pool2, y)

    # pool2 row layout: n*64 + h2*8 + w2  (w2 == 7 rows are junk and are matched
    # by all-zero fc1 weight rows downstream).
    for n in range(N):
        out_ref[n, :, :] = pool2[64 * n:64 * n + 56, :]


# ----------------------------------------------------------------------------
# Kernel B: fc1 + bias + ReLU + fc2 + bias + log_softmax.
# ----------------------------------------------------------------------------
def _fc_stage_kernel(x_ref, w1_ref, b1_ref, w2_ref, b2_ref, o_ref):
    h = jnp.dot(x_ref[...], w1_ref[...], preferred_element_type=jnp.float32)
    h = jnp.maximum(h + b1_ref[...], 0.0)
    z = jnp.dot(h, w2_ref[...], preferred_element_type=jnp.float32) + b2_ref[...]
    m = jnp.max(z, axis=-1, keepdims=True)
    s = z - m
    lse = jnp.log(jnp.sum(jnp.exp(s), axis=-1, keepdims=True))
    o_ref[...] = (s - lse).astype(o_ref.dtype)


# ----------------------------------------------------------------------------
# Forward pass (2 pallas_calls).
# ----------------------------------------------------------------------------
def cnn_forward(x_nchw, kparams):
    w1m, b1, w2m, b2, wf1k, bf1, wf2, bf2 = kparams
    N, C, H, W = x_nchw.shape
    assert C == 1 and H == 28 and W == 28, "CNN expects [N,1,28,28] inputs"

    p1, mask = _conv1_pool_patches(x_nchw[:, 0])              # tiny glue
    rows = 4 * N * 64

    conv_out = pl.pallas_call(
        _conv_stage_kernel,
        out_shape=jax.ShapeDtypeStruct((N, 56, 32), jnp.float32),
        grid=(1,),
        in_specs=[
            pl.BlockSpec((4, rows, 9), lambda i: (0, 0, 0)),
            pl.BlockSpec((rows, 1), lambda i: (0, 0)),
            pl.BlockSpec((9, 32), lambda i: (0, 0)),
            pl.BlockSpec((1, 32), lambda i: (0, 0)),
            pl.BlockSpec((9, 32, 32), lambda i: (0, 0, 0)),
            pl.BlockSpec((1, 32), lambda i: (0, 0)),
        ],
        out_specs=pl.BlockSpec((N, 56, 32), lambda i: (0, 0, 0)),
        scratch_shapes=[pltpu.VMEM((rows + 8, 32), jnp.float32)],
        compiler_params=pltpu.CompilerParams(dimension_semantics=("arbitrary",)),
    )(p1, mask, w1m, b1, w2m, b2)

    feat = conv_out.reshape(N, 56 * 32)                        # [N, 1792]

    out = pl.pallas_call(
        _fc_stage_kernel,
        out_shape=jax.ShapeDtypeStruct((N, 10), jnp.float32),
        grid=(1,),
        in_specs=[
            pl.BlockSpec((N, 1792), lambda i: (0, 0)),
            pl.BlockSpec((1792, 500), lambda i: (0, 0)),
            pl.BlockSpec((1, 500), lambda i: (0, 0)),
            pl.BlockSpec((500, 10), lambda i: (0, 0)),
            pl.BlockSpec((1, 10), lambda i: (0, 0)),
        ],
        out_specs=pl.BlockSpec((N, 10), lambda i: (0, 0)),
        compiler_params=pltpu.CompilerParams(dimension_semantics=("arbitrary",)),
    )(feat, wf1k, bf1, wf2, bf2)
    return out


# ----------------------------------------------------------------------------
# One-time weight layout preparation (PyTorch layout -> kernel layout).
# ----------------------------------------------------------------------------
def prepare_params(params):
    w1, b1, w2, b2, wf1, bf1, wf2, bf2 = params
    w1m = jnp.transpose(w1[:, 0, :, :], (1, 2, 0)).reshape(9, 32)     # [tap, cout]
    w2m = jnp.transpose(w2, (2, 3, 1, 0)).reshape(9, 32, 32)          # [tap, cin, cout]

    # fc1 rows reordered from PyTorch (c, h, w) flatten order to the kernel's
    # (h2, w2-padded-to-8, c) feature order; the padding (w2==7) rows are zero.
    l = np.arange(56)
    h2 = l // 8
    w2i = l % 8
    c = np.arange(32)
    src = (c[None, :] * 49 + h2[:, None] * 7 + np.minimum(w2i, 6)[:, None])
    src = src.reshape(-1).astype(np.int32)                            # index = l*32 + c
    valid = np.broadcast_to((w2i < 7)[:, None], (56, 32)).reshape(-1, 1)
    wf1k = wf1[jnp.asarray(src), :] * jnp.asarray(valid.astype(np.float32))
    # TODO(synk): wf1k could be stored as bf16 (with f32 MXU accumulation) to
    # halve the dominant HBM fetch; kept f32 here to preserve the 1e-3 check.

    return (w1m, b1.reshape(1, 32), w2m, b2.reshape(1, 32),
            wf1k, bf1.reshape(1, 500), wf2, bf2.reshape(1, 10))


# ----------------------------------------------------------------------------
# Deterministic synthetic parameters + pure-JAX reference.
# ----------------------------------------------------------------------------
def init_params(key):
    ks = jax.random.split(key, 8)
    scale = 0.05
    w1 = scale * jax.random.normal(ks[0], (32, 1, 3, 3), jnp.float32)
    b1 = scale * jax.random.normal(ks[1], (32,), jnp.float32)
    w2 = scale * jax.random.normal(ks[2], (32, 32, 3, 3), jnp.float32)
    b2 = scale * jax.random.normal(ks[3], (32,), jnp.float32)
    wf1 = scale * jax.random.normal(ks[4], (16 * 98, 500), jnp.float32)  # [in, out]
    bf1 = scale * jax.random.normal(ks[5], (500,), jnp.float32)
    wf2 = scale * jax.random.normal(ks[6], (500, 10), jnp.float32)       # [in, out]
    bf2 = scale * jax.random.normal(ks[7], (10,), jnp.float32)
    return (w1, b1, w2, b2, wf1, bf1, wf2, bf2)


def reference(x_nchw, params):
    w1, b1, w2, b2, wf1, bf1, wf2, bf2 = params
    dn = ("NCHW", "OIHW", "NCHW")
    hi = lax.Precision.HIGHEST
    y = lax.conv_general_dilated(x_nchw, w1, (1, 1), "SAME",
                                 dimension_numbers=dn, precision=hi)
    y = jnp.maximum(y + b1[None, :, None, None], 0.0)
    y = lax.reduce_window(y, -jnp.inf, lax.max, (1, 1, 2, 2), (1, 1, 2, 2), "VALID")
    y = lax.conv_general_dilated(y, w2, (1, 1), "SAME",
                                 dimension_numbers=dn, precision=hi)
    y = jnp.maximum(y + b2[None, :, None, None], 0.0)
    y = lax.reduce_window(y, -jnp.inf, lax.max, (1, 1, 2, 2), (1, 1, 2, 2), "VALID")
    y = y.reshape(y.shape[0], -1)                      # NCHW flatten, like .view
    y = jnp.maximum(jnp.dot(y, wf1, precision=hi) + bf1, 0.0)
    y = jnp.dot(y, wf2, precision=hi) + bf2
    return jax.nn.log_softmax(y, axis=1)


# TODO(synk): BatchNorm2d/BatchNorm1d branch (batchnorm=True) not implemented;
# the module's default constructor disables it.

if __name__ == "__main__":
    key = jax.random.PRNGKey(0)
    kx, kp = jax.random.split(key)
    x = jax.random.normal(kx, (2, 1, 28, 28), jnp.float32)   # MNIST-like input
    params = init_params(kp)
    kparams = prepare_params(params)

    fwd = jax.jit(cnn_forward)
    out = jax.block_until_ready(fwd(x, kparams))
    assert out.shape == (2, 10) and out.dtype == jnp.float32

    ref = jax.block_until_ready(jax.jit(reference)(x, params))
    np.testing.assert_allclose(np.asarray(out), np.asarray(ref), rtol=1e-3, atol=1e-3)

    print("KERNEL_OK")
</pallas_src>

<mosaic_0001>
module attributes {stable_mosaic.version = 11 : i64} {
  func.func @_conv_stage_kernel(%arg0: i32, %arg1: memref<4x512x9xf32, #tpu.memory_space<vmem>>, %arg2: memref<512x1xf32, #tpu.memory_space<vmem>>, %arg3: memref<9x32xf32, #tpu.memory_space<vmem>>, %arg4: memref<1x32xf32, #tpu.memory_space<vmem>>, %arg5: memref<9x32x32xf32, #tpu.memory_space<vmem>>, %arg6: memref<1x32xf32, #tpu.memory_space<vmem>>, %arg7: memref<2x56x32xf32, #tpu.memory_space<vmem>>, %arg8: memref<520x32xf32, #tpu.memory_space<vmem>>) attributes {dimension_semantics = [#tpu.dimension_semantics<arbitrary>], iteration_bounds = array<i64: 1>, scalar_prefetch = 0 : i64, scratch_operands = 1 : i64, tpu.core_type = #tpu.core_type<tc>, window_params = [{pipeline_mode = #tpu.pipeline_mode<synchronous>, transform_indices = @transform_0, window_bounds = array<i64: 4, 512, 9>}, {pipeline_mode = #tpu.pipeline_mode<synchronous>, transform_indices = @transform_1, window_bounds = array<i64: 512, 1>}, {pipeline_mode = #tpu.pipeline_mode<synchronous>, transform_indices = @transform_2, window_bounds = array<i64: 9, 32>}, {pipeline_mode = #tpu.pipeline_mode<synchronous>, transform_indices = @transform_3, window_bounds = array<i64: 1, 32>}, {pipeline_mode = #tpu.pipeline_mode<synchronous>, transform_indices = @transform_4, window_bounds = array<i64: 9, 32, 32>}, {pipeline_mode = #tpu.pipeline_mode<synchronous>, transform_indices = @transform_5, window_bounds = array<i64: 1, 32>}, {pipeline_mode = #tpu.pipeline_mode<synchronous>, transform_indices = @transform_6, window_bounds = array<i64: 2, 56, 32>}]} {
    %c0 = arith.constant 0 : index
    %c0_0 = arith.constant 0 : index
    %0 = vector.load %arg3[%c0, %c0_0] : memref<9x32xf32, #tpu.memory_space<vmem>>, vector<9x32xf32>
    %c0_1 = arith.constant 0 : index
    %c0_2 = arith.constant 0 : index
    %1 = vector.load %arg4[%c0_1, %c0_2] : memref<1x32xf32, #tpu.memory_space<vmem>>, vector<1x32xf32>
    %c0_3 = arith.constant 0 : index
    %c0_4 = arith.constant 0 : index
    %c0_5 = arith.constant 0 : index
    %2 = vector.load %arg1[%c0_3, %c0_4, %c0_5] : memref<4x512x9xf32, #tpu.memory_space<vmem>>, vector<1x512x9xf32>
    %3 = vector.shape_cast %2 : vector<1x512x9xf32> to vector<512x9xf32>
    %cst = arith.constant dense<0.000000e+00> : vector<512x32xf32>
    %4 = tpu.matmul %3, %0, %cst {dimension_numbers = #tpu.dot_dimension_numbers<[1], [0], [0], [1], [0, 0, 1, 1], [], []>} : vector<512x9xf32>, vector<9x32xf32>, vector<512x32xf32> -> vector<512x32xf32>
    %5 = vector.broadcast %1 : vector<1x32xf32> to vector<512x32xf32>
    %6 = arith.addf %4, %5 : vector<512x32xf32>
    %cst_6 = arith.constant 0.000000e+00 : f32
    %7 = vector.broadcast %cst_6 : f32 to vector<512x32xf32>
    %8 = arith.maximumf %6, %7 : vector<512x32xf32>
    %c1 = arith.constant 1 : index
    %c0_7 = arith.constant 0 : index
    %c0_8 = arith.constant 0 : index
    %9 = vector.load %arg1[%c1, %c0_7, %c0_8] : memref<4x512x9xf32, #tpu.memory_space<vmem>>, vector<1x512x9xf32>
    %10 = vector.shape_cast %9 : vector<1x512x9xf32> to vector<512x9xf32>
    %cst_9 = arith.constant dense<0.000000e+00> : vector<512x32xf32>
    %11 = tpu.matmul %10, %0, %cst_9 {dimension_numbers = #tpu.dot_dimension_numbers<[1], [0], [0], [1], [0, 0, 1, 1], [], []>} : vector<512x9xf32>, vector<9x32xf32>, vector<512x32xf32> -> vector<512x32xf32>
    %12 = vector.broadcast %1 : vector<1x32xf32> to vector<512x32xf32>
    %13 = arith.addf %11, %12 : vector<512x32xf32>
    %cst_10 = arith.constant 0.000000e+00 : f32
    %14 = vector.broadcast %cst_10 : f32 to vector<512x32xf32>
    %15 = arith.maximumf %13, %14 : vector<512x32xf32>
    %16 = arith.maximumf %8, %15 : vector<512x32xf32>
    %c2 = arith.constant 2 : index
    %c0_11 = arith.constant 0 : index
    %c0_12 = arith.constant 0 : index
    %17 = vector.load %arg1[%c2, %c0_11, %c0_12] : memref<4x512x9xf32, #tpu.memory_space<vmem>>, vector<1x512x9xf32>
    %18 = vector.shape_cast %17 : vector<1x512x9xf32> to vector<512x9xf32>
    %cst_13 = arith.constant dense<0.000000e+00> : vector<512x32xf32>
    %19 = tpu.matmul %18, %0, %cst_13 {dimension_numbers = #tpu.dot_dimension_numbers<[1], [0], [0], [1], [0, 0, 1, 1], [], []>} : vector<512x9xf32>, vector<9x32xf32>, vector<512x32xf32> -> vector<512x32xf32>
    %20 = vector.broadcast %1 : vector<1x32xf32> to vector<512x32xf32>
    %21 = arith.addf %19, %20 : vector<512x32xf32>
    %cst_14 = arith.constant 0.000000e+00 : f32
    %22 = vector.broadcast %cst_14 : f32 to vector<512x32xf32>
    %23 = arith.maximumf %21, %22 : vector<512x32xf32>
    %24 = arith.maximumf %16, %23 : vector<512x32xf32>
    %c3 = arith.constant 3 : index
    %c0_15 = arith.constant 0 : index
    %c0_16 = arith.constant 0 : index
    %25 = vector.load %arg1[%c3, %c0_15, %c0_16] : memref<4x512x9xf32, #tpu.memory_space<vmem>>, vector<1x512x9xf32>
    %26 = vector.shape_cast %25 : vector<1x512x9xf32> to vector<512x9xf32>
    %cst_17 = arith.constant dense<0.000000e+00> : vector<512x32xf32>
    %27 = tpu.matmul %26, %0, %cst_17 {dimension_numbers = #tpu.dot_dimension_numbers<[1], [0], [0], [1], [0, 0, 1, 1], [], []>} : vector<512x9xf32>, vector<9x32xf32>, vector<512x32xf32> -> vector<512x32xf32>
    %28 = vector.broadcast %1 : vector<1x32xf32> to vector<512x32xf32>
    %29 = arith.addf %27, %28 : vector<512x32xf32>
    %cst_18 = arith.constant 0.000000e+00 : f32
    %30 = vector.broadcast %cst_18 : f32 to vector<512x32xf32>
    %31 = arith.maximumf %29, %30 : vector<512x32xf32>
    %32 = arith.maximumf %24, %31 : vector<512x32xf32>
    %c0_19 = arith.constant 0 : index
    %c0_20 = arith.constant 0 : index
    %33 = vector.load %arg2[%c0_19, %c0_20] : memref<512x1xf32, #tpu.memory_space<vmem>>, vector<512x1xf32>
    %34 = vector.broadcast %33 : vector<512x1xf32> to vector<512x32xf32>
    %35 = arith.mulf %32, %34 : vector<512x32xf32>
    %cst_21 = arith.constant 0.000000e+00 : f32
    %36 = vector.broadcast %cst_21 : f32 to vector<520x32xf32>
    %c0_22 = arith.constant 0 : index
    %c0_23 = arith.constant 0 : index
    %37 = vector.load %arg8[%c0_22, %c0_23] : memref<520x32xf32, #tpu.memory_space<vmem>>, vector<520x32xf32>
    tpu.vector_store %arg8[%c0_22, %c0_23], %36 {strides = array<i32>} : memref<520x32xf32, #tpu.memory_space<vmem>>, vector<520x32xf32>,
    %c0_24 = arith.constant 0 : index
    %c0_25 = arith.constant 0 : index
    %38 = vector.load %arg8[%c0_24, %c0_25] : memref<520x32xf32, #tpu.memory_space<vmem>>, vector<512x32xf32>
    tpu.vector_store %arg8[%c0_24, %c0_25], %35 {strides = array<i32>} : memref<520x32xf32, #tpu.memory_space<vmem>>, vector<512x32xf32>,
    %c0_26 = arith.constant 0 : index
    %c0_27 = arith.constant 0 : index
    %39 = vector.load %arg6[%c0_26, %c0_27] : memref<1x32xf32, #tpu.memory_space<vmem>>, vector<1x32xf32>
    %cst_28 = arith.constant 0.000000e+00 : f32
    %40 = vector.broadcast %cst_28 : f32 to vector<120x32xf32>
    %c0_29 = arith.constant 0 : index
    %c0_30 = arith.constant 0 : index
    %41 = vector.load %arg8[%c0_29, %c0_30] : memref<520x32xf32, #tpu.memory_space<vmem>>, vector<120x32xf32>
    %c0_31 = arith.constant 0 : index
    %c0_32 = arith.constant 0 : index
    %c0_33 = arith.constant 0 : index
    %42 = vector.load %arg5[%c0_31, %c0_32, %c0_33] : memref<9x32x32xf32, #tpu.memory_space<vmem>>, vector<1x32x32xf32>
    %43 = vector.shape_cast %42 : vector<1x32x32xf32> to vector<32x32xf32>
    %cst_34 = arith.constant dense<0.000000e+00> : vector<120x32xf32>
    %44 = tpu.matmul %41, %43, %cst_34 {dimension_numbers = #tpu.dot_dimension_numbers<[1], [0], [0], [1], [0, 0, 1, 1], [], []>} : vector<120x32xf32>, vector<32x32xf32>, vector<120x32xf32> -> vector<120x32xf32>
    %45 = arith.addf %40, %44 : vector<120x32xf32>
    %c128 = arith.constant 128 : index
    %c0_35 = arith.constant 0 : index
    %46 = vector.load %arg8[%c128, %c0_35] : memref<520x32xf32, #tpu.memory_space<vmem>>, vector<120x32xf32>
    %c1_36 = arith.constant 1 : index
    %c0_37 = arith.constant 0 : index
    %c0_38 = arith.constant 0 : index
    %47 = vector.load %arg5[%c1_36, %c0_37, %c0_38] : memref<9x32x32xf32, #tpu.memory_space<vmem>>, vector<1x32x32xf32>
    %48 = vector.shape_cast %47 : vector<1x32x32xf32> to vector<32x32xf32>
    %cst_39 = arith.constant dense<0.000000e+00> : vector<120x32xf32>
    %49 = tpu.matmul %46, %48, %cst_39 {dimension_numbers = #tpu.dot_dimension_numbers<[1], [0], [0], [1], [0, 0, 1, 1], [], []>} : vector<120x32xf32>, vector<32x32xf32>, vector<120x32xf32> -> vector<120x32xf32>
    %50 = arith.addf %45, %49 : vector<120x32xf32>
    %c1_40 = arith.constant 1 : index
    %c0_41 = arith.constant 0 : index
    %51 = vector.load %arg8[%c1_40, %c0_41] : memref<520x32xf32, #tpu.memory_space<vmem>>, vector<120x32xf32>
    %c2_42 = arith.constant 2 : index
    %c0_43 = arith.constant 0 : index
    %c0_44 = arith.constant 0 : index
    %52 = vector.load %arg5[%c2_42, %c0_43, %c0_44] : memref<9x32x32xf32, #tpu.memory_space<vmem>>, vector<1x32x32xf32>
    %53 = vector.shape_cast %52 : vector<1x32x32xf32> to vector<32x32xf32>
    %cst_45 = arith.constant dense<0.000000e+00> : vector<120x32xf32>
    %54 = tpu.matmul %51, %53, %cst_45 {dimension_numbers = #tpu.dot_dimension_numbers<[1], [0], [0], [1], [0, 0, 1, 1], [], []>} : vector<120x32xf32>, vector<32x32xf32>, vector<120x32xf32> -> vector<120x32xf32>
    %55 = arith.addf %50, %54 : vector<120x32xf32>
    %c256 = arith.constant 256 : index
    %c0_46 = arith.constant 0 : index
    %56 = vector.load %arg8[%c256, %c0_46] : memref<520x32xf32, #tpu.memory_space<vmem>>, vector<120x32xf32>
    %c3_47 = arith.constant 3 : index
    %c0_48 = arith.constant 0 : index
    %c0_49 = arith.constant 0 : index
    %57 = vector.load %arg5[%c3_47, %c0_48, %c0_49] : memref<9x32x32xf32, #tpu.memory_space<vmem>>, vector<1x32x32xf32>
    %58 = vector.shape_cast %57 : vector<1x32x32xf32> to vector<32x32xf32>
    %cst_50 = arith.constant dense<0.000000e+00> : vector<120x32xf32>
    %59 = tpu.matmul %56, %58, %cst_50 {dimension_numbers = #tpu.dot_dimension_numbers<[1], [0], [0], [1], [0, 0, 1, 1], [], []>} : vector<120x32xf32>, vector<32x32xf32>, vector<120x32xf32> -> vector<120x32xf32>
    %60 = arith.addf %55, %59 : vector<120x32xf32>
    %c384 = arith.constant 384 : index
    %c0_51 = arith.constant 0 : index
    %61 = vector.load %arg8[%c384, %c0_51] : memref<520x32xf32, #tpu.memory_space<vmem>>, vector<120x32xf32>
    %c4 = arith.constant 4 : index
    %c0_52 = arith.constant 0 : index
    %c0_53 = arith.constant 0 : index
    %62 = vector.load %arg5[%c4, %c0_52, %c0_53] : memref<9x32x32xf32, #tpu.memory_space<vmem>>, vector<1x32x32xf32>
    %63 = vector.shape_cast %62 : vector<1x32x32xf32> to vector<32x32xf32>
    %cst_54 = arith.constant dense<0.000000e+00> : vector<120x32xf32>
    %64 = tpu.matmul %61, %63, %cst_54 {dimension_numbers = #tpu.dot_dimension_numbers<[1], [0], [0], [1], [0, 0, 1, 1], [], []>} : vector<120x32xf32>, vector<32x32xf32>, vector<120x32xf32> -> vector<120x32xf32>
    %65 = arith.addf %60, %64 : vector<120x32xf32>
    %c257 = arith.constant 257 : index
    %c0_55 = arith.constant 0 : index
    %66 = vector.load %arg8[%c257, %c0_55] : memref<520x32xf32, #tpu.memory_space<vmem>>, vector<120x32xf32>
    %c5 = arith.constant 5 : index
    %c0_56 = arith.constant 0 : index
    %c0_57 = arith.constant 0 : index
    %67 = vector.load %arg5[%c5, %c0_56, %c0_57] : memref<9x32x32xf32, #tpu.memory_space<vmem>>, vector<1x32x32xf32>
    %68 = vector.shape_cast %67 : vector<1x32x32xf32> to vector<32x32xf32>
    %cst_58 = arith.constant dense<0.000000e+00> : vector<120x32xf32>
    %69 = tpu.matmul %66, %68, %cst_58 {dimension_numbers = #tpu.dot_dimension_numbers<[1], [0], [0], [1], [0, 0, 1, 1], [], []>} : vector<120x32xf32>, vector<32x32xf32>, vector<120x32xf32> -> vector<120x32xf32>
    %70 = arith.addf %65, %69 : vector<120x32xf32>
    %c8 = arith.constant 8 : index
    %c0_59 = arith.constant 0 : index
    %71 = vector.load %arg8[%c8, %c0_59] : memref<520x32xf32, #tpu.memory_space<vmem>>, vector<120x32xf32>
    %c6 = arith.constant 6 : index
    %c0_60 = arith.constant 0 : index
    %c0_61 = arith.constant 0 : index
    %72 = vector.load %arg5[%c6, %c0_60, %c0_61] : memref<9x32x32xf32, #tpu.memory_space<vmem>>, vector<1x32x32xf32>
    %73 = vector.shape_cast %72 : vector<1x32x32xf32> to vector<32x32xf32>
    %cst_62 = arith.constant dense<0.000000e+00> : vector<120x32xf32>
    %74 = tpu.matmul %71, %73, %cst_62 {dimension_numbers = #tpu.dot_dimension_numbers<[1], [0], [0], [1], [0, 0, 1, 1], [], []>} : vector<120x32xf32>, vector<32x32xf32>, vector<120x32xf32> -> vector<120x32xf32>
    %75 = arith.addf %70, %74 : vector<120x32xf32>
    %c136 = arith.constant 136 : index
    %c0_63 = arith.constant 0 : index
    %76 = vector.load %arg8[%c136, %c0_63] : memref<520x32xf32, #tpu.memory_space<vmem>>, vector<120x32xf32>
    %c7 = arith.constant 7 : index
    %c0_64 = arith.constant 0 : index
    %c0_65 = arith.constant 0 : index
    %77 = vector.load %arg5[%c7, %c0_64, %c0_65] : memref<9x32x32xf32, #tpu.memory_space<vmem>>, vector<1x32x32xf32>
    %78 = vector.shape_cast %77 : vector<1x32x32xf32> to vector<32x32xf32>
    %cst_66 = arith.constant dense<0.000000e+00> : vector<120x32xf32>
    %79 = tpu.matmul %76, %78, %cst_66 {dimension_numbers = #tpu.dot_dimension_numbers<[1], [0], [0], [1], [0, 0, 1, 1], [], []>} : vector<120x32xf32>, vector<32x32xf32>, vector<120x32xf32> -> vector<120x32xf32>
    %80 = arith.addf %75, %79 : vector<120x32xf32>
    %c9 = arith.constant 9 : index
    %c0_67 = arith.constant 0 : index
    %81 = vector.load %arg8[%c9, %c0_67] : memref<520x32xf32, #tpu.memory_space<vmem>>, vector<120x32xf32>
    %c8_68 = arith.constant 8 : index
    %c0_69 = arith.constant 0 : index
    %c0_70 = arith.constant 0 : index
    %82 = vector.load %arg5[%c8_68, %c0_69, %c0_70] : memref<9x32x32xf32, #tpu.memory_space<vmem>>, vector<1x32x32xf32>
    %83 = vector.shape_cast %82 : vector<1x32x32xf32> to vector<32x32xf32>
    %cst_71 = arith.constant dense<0.000000e+00> : vector<120x32xf32>
    %84 = tpu.matmul %81, %83, %cst_71 {dimension_numbers = #tpu.dot_dimension_numbers<[1], [0], [0], [1], [0, 0, 1, 1], [], []>} : vector<120x32xf32>, vector<32x32xf32>, vector<120x32xf32> -> vector<120x32xf32>
    %85 = arith.addf %80, %84 : vector<120x32xf32>
    %86 = vector.broadcast %39 : vector<1x32xf32> to vector<120x32xf32>
    %87 = arith.addf %85, %86 : vector<120x32xf32>
    %cst_72 = arith.constant 0.000000e+00 : f32
    %88 = vector.broadcast %cst_72 : f32 to vector<120x32xf32>
    %89 = arith.maximumf %87, %88 : vector<120x32xf32>
    %cst_73 = arith.constant 0.000000e+00 : f32
    %90 = vector.broadcast %cst_73 : f32 to vector<120x32xf32>
    %c128_74 = arith.constant 128 : index
    %c0_75 = arith.constant 0 : index
    %91 = vector.load %arg8[%c128_74, %c0_75] : memref<520x32xf32, #tpu.memory_space<vmem>>, vector<120x32xf32>
    %c0_76 = arith.constant 0 : index
    %c0_77 = arith.constant 0 : index
    %c0_78 = arith.constant 0 : index
    %92 = vector.load %arg5[%c0_76, %c0_77, %c0_78] : memref<9x32x32xf32, #tpu.memory_space<vmem>>, vector<1x32x32xf32>
    %93 = vector.shape_cast %92 : vector<1x32x32xf32> to vector<32x32xf32>
    %cst_79 = arith.constant dense<0.000000e+00> : vector<120x32xf32>
    %94 = tpu.matmul %91, %93, %cst_79 {dimension_numbers = #tpu.dot_dimension_numbers<[1], [0], [0], [1], [0, 0, 1, 1], [], []>} : vector<120x32xf32>, vector<32x32xf32>, vector<120x32xf32> -> vector<120x32xf32>
    %95 = arith.addf %90, %94 : vector<120x32xf32>
    %c1_80 = arith.constant 1 : index
    %c0_81 = arith.constant 0 : index
    %96 = vector.load %arg8[%c1_80, %c0_81] : memref<520x32xf32, #tpu.memory_space<vmem>>, vector<120x32xf32>
    %c1_82 = arith.constant 1 : index
    %c0_83 = arith.constant 0 : index
    %c0_84 = arith.constant 0 : index
    %97 = vector.load %arg5[%c1_82, %c0_83, %c0_84] : memref<9x32x32xf32, #tpu.memory_space<vmem>>, vector<1x32x32xf32>
    %98 = vector.shape_cast %97 : vector<1x32x32xf32> to vector<32x32xf32>
    %cst_85 = arith.constant dense<0.000000e+00> : vector<120x32xf32>
    %99 = tpu.matmul %96, %98, %cst_85 {dimension_numbers = #tpu.dot_dimension_numbers<[1], [0], [0], [1], [0, 0, 1, 1], [], []>} : vector<120x32xf32>, vector<32x32xf32>, vector<120x32xf32> -> vector<120x32xf32>
    %100 = arith.addf %95, %99 : vector<120x32xf32>
    %c129 = arith.constant 129 : index
    %c0_86 = arith.constant 0 : index
    %101 = vector.load %arg8[%c129, %c0_86] : memref<520x32xf32, #tpu.memory_space<vmem>>, vector<120x32xf32>
    %c2_87 = arith.constant 2 : index
    %c0_88 = arith.constant 0 : index
    %c0_89 = arith.constant 0 : index
    %102 = vector.load %arg5[%c2_87, %c0_88, %c0_89] : memref<9x32x32xf32, #tpu.memory_space<vmem>>, vector<1x32x32xf32>
    %103 = vector.shape_cast %102 : vector<1x32x32xf32> to vector<32x32xf32>
    %cst_90 = arith.constant dense<0.000000e+00> : vector<120x32xf32>
    %104 = tpu.matmul %101, %103, %cst_90 {dimension_numbers = #tpu.dot_dimension_numbers<[1], [0], [0], [1], [0, 0, 1, 1], [], []>} : vector<120x32xf32>, vector<32x32xf32>, vector<120x32xf32> -> vector<120x32xf32>
    %105 = arith.addf %100, %104 : vector<120x32xf32>
    %c384_91 = arith.constant 384 : index
    %c0_92 = arith.constant 0 : index
    %106 = vector.load %arg8[%c384_91, %c0_92] : memref<520x32xf32, #tpu.memory_space<vmem>>, vector<120x32xf32>
    %c3_93 = arith.constant 3 : index
    %c0_94 = arith.constant 0 : index
    %c0_95 = arith.constant 0 : index
    %107 = vector.load %arg5[%c3_93, %c0_94, %c0_95] : memref<9x32x32xf32, #tpu.memory_space<vmem>>, vector<1x32x32xf32>
    %108 = vector.shape_cast %107 : vector<1x32x32xf32> to vector<32x32xf32>
    %cst_96 = arith.constant dense<0.000000e+00> : vector<120x32xf32>
    %109 = tpu.matmul %106, %108, %cst_96 {dimension_numbers = #tpu.dot_dimension_numbers<[1], [0], [0], [1], [0, 0, 1, 1], [], []>} : vector<120x32xf32>, vector<32x32xf32>, vector<120x32xf32> -> vector<120x32xf32>
    %110 = arith.addf %105, %109 : vector<120x32xf32>
    %c257_97 = arith.constant 257 : index
    %c0_98 = arith.constant 0 : index
    %111 = vector.load %arg8[%c257_97, %c0_98] : memref<520x32xf32, #tpu.memory_space<vmem>>, vector<120x32xf32>
    %c4_99 = arith.constant 4 : index
    %c0_100 = arith.constant 0 : index
    %c0_101 = arith.constant 0 : index
    %112 = vector.load %arg5[%c4_99, %c0_100, %c0_101] : memref<9x32x32xf32, #tpu.memory_space<vmem>>, vector<1x32x32xf32>
    %113 = vector.shape_cast %112 : vector<1x32x32xf32> to vector<32x32xf32>
    %cst_102 = arith.constant dense<0.000000e+00> : vector<120x32xf32>
    %114 = tpu.matmul %111, %113, %cst_102 {dimension_numbers = #tpu.dot_dimension_numbers<[1], [0], [0], [1], [0, 0, 1, 1], [], []>} : vector<120x32xf32>, vector<32x32xf32>, vector<120x32xf32> -> vector<120x32xf32>
    %115 = arith.addf %110, %114 : vector<120x32xf32>
    %c385 = arith.constant 385 : index
    %c0_103 = arith.constant 0 : index
    %116 = vector.load %arg8[%c385, %c0_103] : memref<520x32xf32, #tpu.memory_space<vmem>>, vector<120x32xf32>
    %c5_104 = arith.constant 5 : index
    %c0_105 = arith.constant 0 : index
    %c0_106 = arith.constant 0 : index
    %117 = vector.load %arg5[%c5_104, %c0_105, %c0_106] : memref<9x32x32xf32, #tpu.memory_space<vmem>>, vector<1x32x32xf32>
    %118 = vector.shape_cast %117 : vector<1x32x32xf32> to vector<32x32xf32>
    %cst_107 = arith.constant dense<0.000000e+00> : vector<120x32xf32>
    %119 = tpu.matmul %116, %118, %cst_107 {dimension_numbers = #tpu.dot_dimension_numbers<[1], [0], [0], [1], [0, 0, 1, 1], [], []>} : vector<120x32xf32>, vector<32x32xf32>, vector<120x32xf32> -> vector<120x32xf32>
    %120 = arith.addf %115, %119 : vector<120x32xf32>
    %c136_108 = arith.constant 136 : index
    %c0_109 = arith.constant 0 : index
    %121 = vector.load %arg8[%c136_108, %c0_109] : memref<520x32xf32, #tpu.memory_space<vmem>>, vector<120x32xf32>
    %c6_110 = arith.constant 6 : index
    %c0_111 = arith.constant 0 : index
    %c0_112 = arith.constant 0 : index
    %122 = vector.load %arg5[%c6_110, %c0_111, %c0_112] : memref<9x32x32xf32, #tpu.memory_space<vmem>>, vector<1x32x32xf32>
    %123 = vector.shape_cast %122 : vector<1x32x32xf32> to vector<32x32xf32>
    %cst_113 = arith.constant dense<0.000000e+00> : vector<120x32xf32>
    %124 = tpu.matmul %121, %123, %cst_113 {dimension_numbers = #tpu.dot_dimension_numbers<[1], [0], [0], [1], [0, 0, 1, 1], [], []>} : vector<120x32xf32>, vector<32x32xf32>, vector<120x32xf32> -> vector<120x32xf32>
    %125 = arith.addf %120, %124 : vector<120x32xf32>
    %c9_114 = arith.constant 9 : index
    %c0_115 = arith.constant 0 : index
    %126 = vector.load %arg8[%c9_114, %c0_115] : memref<520x32xf32, #tpu.memory_space<vmem>>, vector<120x32xf32>
    %c7_116 = arith.constant 7 : index
    %c0_117 = arith.constant 0 : index
    %c0_118 = arith.constant 0 : index
    %127 = vector.load %arg5[%c7_116, %c0_117, %c0_118] : memref<9x32x32xf32, #tpu.memory_space<vmem>>, vector<1x32x32xf32>
    %128 = vector.shape_cast %127 : vector<1x32x32xf32> to vector<32x32xf32>
    %cst_119 = arith.constant dense<0.000000e+00> : vector<120x32xf32>
    %129 = tpu.matmul %126, %128, %cst_119 {dimension_numbers = #tpu.dot_dimension_numbers<[1], [0], [0], [1], [0, 0, 1, 1], [], []>} : vector<120x32xf32>, vector<32x32xf32>, vector<120x32xf32> -> vector<120x32xf32>
    %130 = arith.addf %125, %129 : vector<120x32xf32>
    %c137 = arith.constant 137 : index
    %c0_120 = arith.constant 0 : index
    %131 = vector.load %arg8[%c137, %c0_120] : memref<520x32xf32, #tpu.memory_space<vmem>>, vector<120x32xf32>
    %c8_121 = arith.constant 8 : index
    %c0_122 = arith.constant 0 : index
    %c0_123 = arith.constant 0 : index
    %132 = vector.load %arg5[%c8_121, %c0_122, %c0_123] : memref<9x32x32xf32, #tpu.memory_space<vmem>>, vector<1x32x32xf32>
    %133 = vector.shape_cast %132 : vector<1x32x32xf32> to vector<32x32xf32>
    %cst_124 = arith.constant dense<0.000000e+00> : vector<120x32xf32>
    %134 = tpu.matmul %131, %133, %cst_124 {dimension_numbers = #tpu.dot_dimension_numbers<[1], [0], [0], [1], [0, 0, 1, 1], [], []>} : vector<120x32xf32>, vector<32x32xf32>, vector<120x32xf32> -> vector<120x32xf32>
    %135 = arith.addf %130, %134 : vector<120x32xf32>
    %136 = vector.broadcast %39 : vector<1x32xf32> to vector<120x32xf32>
    %137 = arith.addf %135, %136 : vector<120x32xf32>
    %cst_125 = arith.constant 0.000000e+00 : f32
    %138 = vector.broadcast %cst_125 : f32 to vector<120x32xf32>
    %139 = arith.maximumf %137, %138 : vector<120x32xf32>
    %140 = arith.maximumf %89, %139 : vector<120x32xf32>
    %cst_126 = arith.constant 0.000000e+00 : f32
    %141 = vector.broadcast %cst_126 : f32 to vector<120x32xf32>
    %c256_127 = arith.constant 256 : index
    %c0_128 = arith.constant 0 : index
    %142 = vector.load %arg8[%c256_127, %c0_128] : memref<520x32xf32, #tpu.memory_space<vmem>>, vector<120x32xf32>
    %c0_129 = arith.constant 0 : index
    %c0_130 = arith.constant 0 : index
    %c0_131 = arith.constant 0 : index
    %143 = vector.load %arg5[%c0_129, %c0_130, %c0_131] : memref<9x32x32xf32, #tpu.memory_space<vmem>>, vector<1x32x32xf32>
    %144 = vector.shape_cast %143 : vector<1x32x32xf32> to vector<32x32xf32>
    %cst_132 = arith.constant dense<0.000000e+00> : vector<120x32xf32>
    %145 = tpu.matmul %142, %144, %cst_132 {dimension_numbers = #tpu.dot_dimension_numbers<[1], [0], [0], [1], [0, 0, 1, 1], [], []>} : vector<120x32xf32>, vector<32x32xf32>, vector<120x32xf32> -> vector<120x32xf32>
    %146 = arith.addf %141, %145 : vector<120x32xf32>
    %c384_133 = arith.constant 384 : index
    %c0_134 = arith.constant 0 : index
    %147 = vector.load %arg8[%c384_133, %c0_134] : memref<520x32xf32, #tpu.memory_space<vmem>>, vector<120x32xf32>
    %c1_135 = arith.constant 1 : index
    %c0_136 = arith.constant 0 : index
    %c0_137 = arith.constant 0 : index
    %148 = vector.load %arg5[%c1_135, %c0_136, %c0_137] : memref<9x32x32xf32, #tpu.memory_space<vmem>>, vector<1x32x32xf32>
    %149 = vector.shape_cast %148 : vector<1x32x32xf32> to vector<32x32xf32>
    %cst_138 = arith.constant dense<0.000000e+00> : vector<120x32xf32>
    %150 = tpu.matmul %147, %149, %cst_138 {dimension_numbers = #tpu.dot_dimension_numbers<[1], [0], [0], [1], [0, 0, 1, 1], [], []>} : vector<120x32xf32>, vector<32x32xf32>, vector<120x32xf32> -> vector<120x32xf32>
    %151 = arith.addf %146, %150 : vector<120x32xf32>
    %c257_139 = arith.constant 257 : index
    %c0_140 = arith.constant 0 : index
    %152 = vector.load %arg8[%c257_139, %c0_140] : memref<520x32xf32, #tpu.memory_space<vmem>>, vector<120x32xf32>
    %c2_141 = arith.constant 2 : index
    %c0_142 = arith.constant 0 : index
    %c0_143 = arith.constant 0 : index
    %153 = vector.load %arg5[%c2_141, %c0_142, %c0_143] : memref<9x32x32xf32, #tpu.memory_space<vmem>>, vector<1x32x32xf32>
    %154 = vector.shape_cast %153 : vector<1x32x32xf32> to vector<32x32xf32>
    %cst_144 = arith.constant dense<0.000000e+00> : vector<120x32xf32>
    %155 = tpu.matmul %152, %154, %cst_144 {dimension_numbers = #tpu.dot_dimension_numbers<[1], [0], [0], [1], [0, 0, 1, 1], [], []>} : vector<120x32xf32>, vector<32x32xf32>, vector<120x32xf32> -> vector<120x32xf32>
    %156 = arith.addf %151, %155 : vector<120x32xf32>
    %c8_145 = arith.constant 8 : index
    %c0_146 = arith.constant 0 : index
    %157 = vector.load %arg8[%c8_145, %c0_146] : memref<520x32xf32, #tpu.memory_space<vmem>>, vector<120x32xf32>
    %c3_147 = arith.constant 3 : index
    %c0_148 = arith.constant 0 : index
    %c0_149 = arith.constant 0 : index
    %158 = vector.load %arg5[%c3_147, %c0_148, %c0_149] : memref<9x32x32xf32, #tpu.memory_space<vmem>>, vector<1x32x32xf32>
    %159 = vector.shape_cast %158 : vector<1x32x32xf32> to vector<32x32xf32>
    %cst_150 = arith.constant dense<0.000000e+00> : vector<120x32xf32>
    %160 = tpu.matmul %157, %159, %cst_150 {dimension_numbers = #tpu.dot_dimension_numbers<[1], [0], [0], [1], [0, 0, 1, 1], [], []>} : vector<120x32xf32>, vector<32x32xf32>, vector<120x32xf32> -> vector<120x32xf32>
    %161 = arith.addf %156, %160 : vector<120x32xf32>
    %c136_151 = arith.constant 136 : index
    %c0_152 = arith.constant 0 : index
    %162 = vector.load %arg8[%c136_151, %c0_152] : memref<520x32xf32, #tpu.memory_space<vmem>>, vector<120x32xf32>
    %c4_153 = arith.constant 4 : index
    %c0_154 = arith.constant 0 : index
    %c0_155 = arith.constant 0 : index
    %163 = vector.load %arg5[%c4_153, %c0_154, %c0_155] : memref<9x32x32xf32, #tpu.memory_space<vmem>>, vector<1x32x32xf32>
    %164 = vector.shape_cast %163 : vector<1x32x32xf32> to vector<32x32xf32>
    %cst_156 = arith.constant dense<0.000000e+00> : vector<120x32xf32>
    %165 = tpu.matmul %162, %164, %cst_156 {dimension_numbers = #tpu.dot_dimension_numbers<[1], [0], [0], [1], [0, 0, 1, 1], [], []>} : vector<120x32xf32>, vector<32x32xf32>, vector<120x32xf32> -> vector<120x32xf32>
    %166 = arith.addf %161, %165 : vector<120x32xf32>
    %c9_157 = arith.constant 9 : index
    %c0_158 = arith.constant 0 : index
    %167 = vector.load %arg8[%c9_157, %c0_158] : memref<520x32xf32, #tpu.memory_space<vmem>>, vector<120x32xf32>
    %c5_159 = arith.constant 5 : index
    %c0_160 = arith.constant 0 : index
    %c0_161 = arith.constant 0 : index
    %168 = vector.load %arg5[%c5_159, %c0_160, %c0_161] : memref<9x32x32xf32, #tpu.memory_space<vmem>>, vector<1x32x32xf32>
    %169 = vector.shape_cast %168 : vector<1x32x32xf32> to vector<32x32xf32>
    %cst_162 = arith.constant dense<0.000000e+00> : vector<120x32xf32>
    %170 = tpu.matmul %167, %169, %cst_162 {dimension_numbers = #tpu.dot_dimension_numbers<[1], [0], [0], [1], [0, 0, 1, 1], [], []>} : vector<120x32xf32>, vector<32x32xf32>, vector<120x32xf32> -> vector<120x32xf32>
    %171 = arith.addf %166, %170 : vector<120x32xf32>
    %c264 = arith.constant 264 : index
    %c0_163 = arith.constant 0 : index
    %172 = vector.load %arg8[%c264, %c0_163] : memref<520x32xf32, #tpu.memory_space<vmem>>, vector<120x32xf32>
    %c6_164 = arith.constant 6 : index
    %c0_165 = arith.constant 0 : index
    %c0_166 = arith.constant 0 : index
    %173 = vector.load %arg5[%c6_164, %c0_165, %c0_166] : memref<9x32x32xf32, #tpu.memory_space<vmem>>, vector<1x32x32xf32>
    %174 = vector.shape_cast %173 : vector<1x32x32xf32> to vector<32x32xf32>
    %cst_167 = arith.constant dense<0.000000e+00> : vector<120x32xf32>
    %175 = tpu.matmul %172, %174, %cst_167 {dimension_numbers = #tpu.dot_dimension_numbers<[1], [0], [0], [1], [0, 0, 1, 1], [], []>} : vector<120x32xf32>, vector<32x32xf32>, vector<120x32xf32> -> vector<120x32xf32>
    %176 = arith.addf %171, %175 : vector<120x32xf32>
    %c392 = arith.constant 392 : index
    %c0_168 = arith.constant 0 : index
    %177 = vector.load %arg8[%c392, %c0_168] : memref<520x32xf32, #tpu.memory_space<vmem>>, vector<120x32xf32>
    %c7_169 = arith.constant 7 : index
    %c0_170 = arith.constant 0 : index
    %c0_171 = arith.constant 0 : index
    %178 = vector.load %arg5[%c7_169, %c0_170, %c0_171] : memref<9x32x32xf32, #tpu.memory_space<vmem>>, vector<1x32x32xf32>
    %179 = vector.shape_cast %178 : vector<1x32x32xf32> to vector<32x32xf32>
    %cst_172 = arith.constant dense<0.000000e+00> : vector<120x32xf32>
    %180 = tpu.matmul %177, %179, %cst_172 {dimension_numbers = #tpu.dot_dimension_numbers<[1], [0], [0], [1], [0, 0, 1, 1], [], []>} : vector<120x32xf32>, vector<32x32xf32>, vector<120x32xf32> -> vector<120x32xf32>
    %181 = arith.addf %176, %180 : vector<120x32xf32>
    %c265 = arith.constant 265 : index
    %c0_173 = arith.constant 0 : index
    %182 = vector.load %arg8[%c265, %c0_173] : memref<520x32xf32, #tpu.memory_space<vmem>>, vector<120x32xf32>
    %c8_174 = arith.constant 8 : index
    %c0_175 = arith.constant 0 : index
    %c0_176 = arith.constant 0 : index
    %183 = vector.load %arg5[%c8_174, %c0_175, %c0_176] : memref<9x32x32xf32, #tpu.memory_space<vmem>>, vector<1x32x32xf32>
    %184 = vector.shape_cast %183 : vector<1x32x32xf32> to vector<32x32xf32>
    %cst_177 = arith.constant dense<0.000000e+00> : vector<120x32xf32>
    %185 = tpu.matmul %182, %184, %cst_177 {dimension_numbers = #tpu.dot_dimension_numbers<[1], [0], [0], [1], [0, 0, 1, 1], [], []>} : vector<120x32xf32>, vector<32x32xf32>, vector<120x32xf32> -> vector<120x32xf32>
    %186 = arith.addf %181, %185 : vector<120x32xf32>
    %187 = vector.broadcast %39 : vector<1x32xf32> to vector<120x32xf32>
    %188 = arith.addf %186, %187 : vector<120x32xf32>
    %cst_178 = arith.constant 0.000000e+00 : f32
    %189 = vector.broadcast %cst_178 : f32 to vector<120x32xf32>
    %190 = arith.maximumf %188, %189 : vector<120x32xf32>
    %191 = arith.maximumf %140, %190 : vector<120x32xf32>
    %cst_179 = arith.constant 0.000000e+00 : f32
    %192 = vector.broadcast %cst_179 : f32 to vector<120x32xf32>
    %c384_180 = arith.constant 384 : index
    %c0_181 = arith.constant 0 : index
    %193 = vector.load %arg8[%c384_180, %c0_181] : memref<520x32xf32, #tpu.memory_space<vmem>>, vector<120x32xf32>
    %c0_182 = arith.constant 0 : index
    %c0_183 = arith.constant 0 : index
    %c0_184 = arith.constant 0 : index
    %194 = vector.load %arg5[%c0_182, %c0_183, %c0_184] : memref<9x32x32xf32, #tpu.memory_space<vmem>>, vector<1x32x32xf32>
    %195 = vector.shape_cast %194 : vector<1x32x32xf32> to vector<32x32xf32>
    %cst_185 = arith.constant dense<0.000000e+00> : vector<120x32xf32>
    %196 = tpu.matmul %193, %195, %cst_185 {dimension_numbers = #tpu.dot_dimension_numbers<[1], [0], [0], [1], [0, 0, 1, 1], [], []>} : vector<120x32xf32>, vector<32x32xf32>, vector<120x32xf32> -> vector<120x32xf32>
    %197 = arith.addf %192, %196 : vector<120x32xf32>
    %c257_186 = arith.constant 257 : index
    %c0_187 = arith.constant 0 : index
    %198 = vector.load %arg8[%c257_186, %c0_187] : memref<520x32xf32, #tpu.memory_space<vmem>>, vector<120x32xf32>
    %c1_188 = arith.constant 1 : index
    %c0_189 = arith.constant 0 : index
    %c0_190 = arith.constant 0 : index
    %199 = vector.load %arg5[%c1_188, %c0_189, %c0_190] : memref<9x32x32xf32, #tpu.memory_space<vmem>>, vector<1x32x32xf32>
    %200 = vector.shape_cast %199 : vector<1x32x32xf32> to vector<32x32xf32>
    %cst_191 = arith.constant dense<0.000000e+00> : vector<120x32xf32>
    %201 = tpu.matmul %198, %200, %cst_191 {dimension_numbers = #tpu.dot_dimension_numbers<[1], [0], [0], [1], [0, 0, 1, 1], [], []>} : vector<120x32xf32>, vector<32x32xf32>, vector<120x32xf32> -> vector<120x32xf32>
    %202 = arith.addf %197, %201 : vector<120x32xf32>
    %c385_192 = arith.constant 385 : index
    %c0_193 = arith.constant 0 : index
    %203 = vector.load %arg8[%c385_192, %c0_193] : memref<520x32xf32, #tpu.memory_space<vmem>>, vector<120x32xf32>
    %c2_194 = arith.constant 2 : index
    %c0_195 = arith.constant 0 : index
    %c0_196 = arith.constant 0 : index
    %204 = vector.load %arg5[%c2_194, %c0_195, %c0_196] : memref<9x32x32xf32, #tpu.memory_space<vmem>>, vector<1x32x32xf32>
    %205 = vector.shape_cast %204 : vector<1x32x32xf32> to vector<32x32xf32>
    %cst_197 = arith.constant dense<0.000000e+00> : vector<120x32xf32>
    %206 = tpu.matmul %203, %205, %cst_197 {dimension_numbers = #tpu.dot_dimension_numbers<[1], [0], [0], [1], [0, 0, 1, 1], [], []>} : vector<120x32xf32>, vector<32x32xf32>, vector<120x32xf32> -> vector<120x32xf32>
    %207 = arith.addf %202, %206 : vector<120x32xf32>
    %c136_198 = arith.constant 136 : index
    %c0_199 = arith.constant 0 : index
    %208 = vector.load %arg8[%c136_198, %c0_199] : memref<520x32xf32, #tpu.memory_space<vmem>>, vector<120x32xf32>
    %c3_200 = arith.constant 3 : index
    %c0_201 = arith.constant 0 : index
    %c0_202 = arith.constant 0 : index
    %209 = vector.load %arg5[%c3_200, %c0_201, %c0_202] : memref<9x32x32xf32, #tpu.memory_space<vmem>>, vector<1x32x32xf32>
    %210 = vector.shape_cast %209 : vector<1x32x32xf32> to vector<32x32xf32>
    %cst_203 = arith.constant dense<0.000000e+00> : vector<120x32xf32>
    %211 = tpu.matmul %208, %210, %cst_203 {dimension_numbers = #tpu.dot_dimension_numbers<[1], [0], [0], [1], [0, 0, 1, 1], [], []>} : vector<120x32xf32>, vector<32x32xf32>, vector<120x32xf32> -> vector<120x32xf32>
    %212 = arith.addf %207, %211 : vector<120x32xf32>
    %c9_204 = arith.constant 9 : index
    %c0_205 = arith.constant 0 : index
    %213 = vector.load %arg8[%c9_204, %c0_205] : memref<520x32xf32, #tpu.memory_space<vmem>>, vector<120x32xf32>
    %c4_206 = arith.constant 4 : index
    %c0_207 = arith.constant 0 : index
    %c0_208 = arith.constant 0 : index
    %214 = vector.load %arg5[%c4_206, %c0_207, %c0_208] : memref<9x32x32xf32, #tpu.memory_space<vmem>>, vector<1x32x32xf32>
    %215 = vector.shape_cast %214 : vector<1x32x32xf32> to vector<32x32xf32>
    %cst_209 = arith.constant dense<0.000000e+00> : vector<120x32xf32>
    %216 = tpu.matmul %213, %215, %cst_209 {dimension_numbers = #tpu.dot_dimension_numbers<[1], [0], [0], [1], [0, 0, 1, 1], [], []>} : vector<120x32xf32>, vector<32x32xf32>, vector<120x32xf32> -> vector<120x32xf32>
    %217 = arith.addf %212, %216 : vector<120x32xf32>
    %c137_210 = arith.constant 137 : index
    %c0_211 = arith.constant 0 : index
    %218 = vector.load %arg8[%c137_210, %c0_211] : memref<520x32xf32, #tpu.memory_space<vmem>>, vector<120x32xf32>
    %c5_212 = arith.constant 5 : index
    %c0_213 = arith.constant 0 : index
    %c0_214 = arith.constant 0 : index
    %219 = vector.load %arg5[%c5_212, %c0_213, %c0_214] : memref<9x32x32xf32, #tpu.memory_space<vmem>>, vector<1x32x32xf32>
    %220 = vector.shape_cast %219 : vector<1x32x32xf32> to vector<32x32xf32>
    %cst_215 = arith.constant dense<0.000000e+00> : vector<120x32xf32>
    %221 = tpu.matmul %218, %220, %cst_215 {dimension_numbers = #tpu.dot_dimension_numbers<[1], [0], [0], [1], [0, 0, 1, 1], [], []>} : vector<120x32xf32>, vector<32x32xf32>, vector<120x32xf32> -> vector<120x32xf32>
    %222 = arith.addf %217, %221 : vector<120x32xf32>
    %c392_216 = arith.constant 392 : index
    %c0_217 = arith.constant 0 : index
    %223 = vector.load %arg8[%c392_216, %c0_217] : memref<520x32xf32, #tpu.memory_space<vmem>>, vector<120x32xf32>
    %c6_218 = arith.constant 6 : index
    %c0_219 = arith.constant 0 : index
    %c0_220 = arith.constant 0 : index
    %224 = vector.load %arg5[%c6_218, %c0_219, %c0_220] : memref<9x32x32xf32, #tpu.memory_space<vmem>>, vector<1x32x32xf32>
    %225 = vector.shape_cast %224 : vector<1x32x32xf32> to vector<32x32xf32>
    %cst_221 = arith.constant dense<0.000000e+00> : vector<120x32xf32>
    %226 = tpu.matmul %223, %225, %cst_221 {dimension_numbers = #tpu.dot_dimension_numbers<[1], [0], [0], [1], [0, 0, 1, 1], [], []>} : vector<120x32xf32>, vector<32x32xf32>, vector<120x32xf32> -> vector<120x32xf32>
    %227 = arith.addf %222, %226 : vector<120x32xf32>
    %c265_222 = arith.constant 265 : index
    %c0_223 = arith.constant 0 : index
    %228 = vector.load %arg8[%c265_222, %c0_223] : memref<520x32xf32, #tpu.memory_space<vmem>>, vector<120x32xf32>
    %c7_224 = arith.constant 7 : index
    %c0_225 = arith.constant 0 : index
    %c0_226 = arith.constant 0 : index
    %229 = vector.load %arg5[%c7_224, %c0_225, %c0_226] : memref<9x32x32xf32, #tpu.memory_space<vmem>>, vector<1x32x32xf32>
    %230 = vector.shape_cast %229 : vector<1x32x32xf32> to vector<32x32xf32>
    %cst_227 = arith.constant dense<0.000000e+00> : vector<120x32xf32>
    %231 = tpu.matmul %228, %230, %cst_227 {dimension_numbers = #tpu.dot_dimension_numbers<[1], [0], [0], [1], [0, 0, 1, 1], [], []>} : vector<120x32xf32>, vector<32x32xf32>, vector<120x32xf32> -> vector<120x32xf32>
    %232 = arith.addf %227, %231 : vector<120x32xf32>
    %c393 = arith.constant 393 : index
    %c0_228 = arith.constant 0 : index
    %233 = vector.load %arg8[%c393, %c0_228] : memref<520x32xf32, #tpu.memory_space<vmem>>, vector<120x32xf32>
    %c8_229 = arith.constant 8 : index
    %c0_230 = arith.constant 0 : index
    %c0_231 = arith.constant 0 : index
    %234 = vector.load %arg5[%c8_229, %c0_230, %c0_231] : memref<9x32x32xf32, #tpu.memory_space<vmem>>, vector<1x32x32xf32>
    %235 = vector.shape_cast %234 : vector<1x32x32xf32> to vector<32x32xf32>
    %cst_232 = arith.constant dense<0.000000e+00> : vector<120x32xf32>
    %236 = tpu.matmul %233, %235, %cst_232 {dimension_numbers = #tpu.dot_dimension_numbers<[1], [0], [0], [1], [0, 0, 1, 1], [], []>} : vector<120x32xf32>, vector<32x32xf32>, vector<120x32xf32> -> vector<120x32xf32>
    %237 = arith.addf %232, %236 : vector<120x32xf32>
    %238 = vector.broadcast %39 : vector<1x32xf32> to vector<120x32xf32>
    %239 = arith.addf %237, %238 : vector<120x32xf32>
    %cst_233 = arith.constant 0.000000e+00 : f32
    %240 = vector.broadcast %cst_233 : f32 to vector<120x32xf32>
    %241 = arith.maximumf %239, %240 : vector<120x32xf32>
    %242 = arith.maximumf %191, %241 : vector<120x32xf32>
    %243 = vector.extract_strided_slice %242 {offsets = [0, 0], sizes = [56, 32], strides = [1, 1]} : vector<120x32xf32> to vector<56x32xf32>
    %c0_234 = arith.constant 0 : index
    %c0_235 = arith.constant 0 : index
    %c0_236 = arith.constant 0 : index
    %244 = vector.load %arg7[%c0_234, %c0_235, %c0_236] : memref<2x56x32xf32, #tpu.memory_space<vmem>>, vector<1x56x32xf32>
    %245 = vector.shape_cast %244 : vector<1x56x32xf32> to vector<56x32xf32>
    %246 = vector.shape_cast %243 : vector<56x32xf32> to vector<1x56x32xf32>
    tpu.vector_store %arg7[%c0_234, %c0_235, %c0_236], %246 {strides = array<i32>} : memref<2x56x32xf32, #tpu.memory_space<vmem>>, vector<1x56x32xf32>,
    %247 = vector.extract_strided_slice %242 {offsets = [64, 0], sizes = [56, 32], strides = [1, 1]} : vector<120x32xf32> to vector<56x32xf32>
    %c1_237 = arith.constant 1 : index
    %c0_238 = arith.constant 0 : index
    %c0_239 = arith.constant 0 : index
    %248 = vector.load %arg7[%c1_237, %c0_238, %c0_239] : memref<2x56x32xf32, #tpu.memory_space<vmem>>, vector<1x56x32xf32>
    %249 = vector.shape_cast %248 : vector<1x56x32xf32> to vector<56x32xf32>
    %250 = vector.shape_cast %247 : vector<56x32xf32> to vector<1x56x32xf32>
    tpu.vector_store %arg7[%c1_237, %c0_238, %c0_239], %250 {strides = array<i32>} : memref<2x56x32xf32, #tpu.memory_space<vmem>>, vector<1x56x32xf32>,
    return
  }
  func.func @transform_0(%arg0: i32) -> (i32, i32, i32) {
    %c0_i32 = arith.constant 0 : i32
    %c0_i32_0 = arith.constant 0 : i32
    %c0_i32_1 = arith.constant 0 : i32
    %c0_i32_2 = arith.constant 0 : i32
    return %c0_i32, %c0_i32_0, %c0_i32_1 : i32, i32, i32
  }
  func.func @transform_1(%arg0: i32) -> (i32, i32) {
    %c0_i32 = arith.constant 0 : i32
    %c0_i32_0 = arith.constant 0 : i32
    %c0_i32_1 = arith.constant 0 : i32
    return %c0_i32, %c0_i32_0 : i32, i32
  }
  func.func @transform_2(%arg0: i32) -> (i32, i32) {
    %c0_i32 = arith.constant 0 : i32
    %c0_i32_0 = arith.constant 0 : i32
    %c0_i32_1 = arith.constant 0 : i32
    return %c0_i32, %c0_i32_0 : i32, i32
  }
  func.func @transform_3(%arg0: i32) -> (i32, i32) {
    %c0_i32 = arith.constant 0 : i32
    %c0_i32_0 = arith.constant 0 : i32
    %c0_i32_1 = arith.constant 0 : i32
    return %c0_i32, %c0_i32_0 : i32, i32
  }
  func.func @transform_4(%arg0: i32) -> (i32, i32, i32) {
    %c0_i32 = arith.constant 0 : i32
    %c0_i32_0 = arith.constant 0 : i32
    %c0_i32_1 = arith.constant 0 : i32
    %c0_i32_2 = arith.constant 0 : i32
    return %c0_i32, %c0_i32_0, %c0_i32_1 : i32, i32, i32
  }
  func.func @transform_5(%arg0: i32) -> (i32, i32) {
    %c0_i32 = arith.constant 0 : i32
    %c0_i32_0 = arith.constant 0 : i32
    %c0_i32_1 = arith.constant 0 : i32
    return %c0_i32, %c0_i32_0 : i32, i32
  }
  func.func @transform_6(%arg0: i32) -> (i32, i32, i32) {
    %c0_i32 = arith.constant 0 : i32
    %c0_i32_0 = arith.constant 0 : i32
    %c0_i32_1 = arith.constant 0 : i32
    %c0_i32_2 = arith.constant 0 : i32
    return %c0_i32, %c0_i32_0, %c0_i32_1 : i32, i32, i32
  }
}

module attributes {stable_mosaic.version = 11 : i64} {
  func.func @_fc_stage_kernel(%arg0: i32, %arg1: memref<2x1792xf32, #tpu.memory_space<vmem>>, %arg2: memref<1792x500xf32, #tpu.memory_space<vmem>>, %arg3: memref<1x500xf32, #tpu.memory_space<vmem>>, %arg4: memref<500x10xf32, #tpu.memory_space<vmem>>, %arg5: memref<1x10xf32, #tpu.memory_space<vmem>>, %arg6: memref<2x10xf32, #tpu.memory_space<vmem>>) attributes {dimension_semantics = [#tpu.dimension_semantics<arbitrary>], iteration_bounds = array<i64: 1>, scalar_prefetch = 0 : i64, scratch_operands = 0 : i64, tpu.core_type = #tpu.core_type<tc>, window_params = [{pipeline_mode = #tpu.pipeline_mode<synchronous>, transform_indices = @transform_0, window_bounds = array<i64: 2, 1792>}, {pipeline_mode = #tpu.pipeline_mode<synchronous>, transform_indices = @transform_1, window_bounds = array<i64: 1792, 500>}, {pipeline_mode = #tpu.pipeline_mode<synchronous>, transform_indices = @transform_2, window_bounds = array<i64: 1, 500>}, {pipeline_mode = #tpu.pipeline_mode<synchronous>, transform_indices = @transform_3, window_bounds = array<i64: 500, 10>}, {pipeline_mode = #tpu.pipeline_mode<synchronous>, transform_indices = @transform_4, window_bounds = array<i64: 1, 10>}, {pipeline_mode = #tpu.pipeline_mode<synchronous>, transform_indices = @transform_5, window_bounds = array<i64: 2, 10>}]} {
    %c0 = arith.constant 0 : index
    %c0_0 = arith.constant 0 : index
    %0 = vector.load %arg1[%c0, %c0_0] : memref<2x1792xf32, #tpu.memory_space<vmem>>, vector<2x1792xf32>
    %c0_1 = arith.constant 0 : index
    %c0_2 = arith.constant 0 : index
    %1 = vector.load %arg2[%c0_1, %c0_2] : memref<1792x500xf32, #tpu.memory_space<vmem>>, vector<1792x500xf32>
    %cst = arith.constant dense<0.000000e+00> : vector<2x500xf32>
    %2 = tpu.matmul %0, %1, %cst {dimension_numbers = #tpu.dot_dimension_numbers<[1], [0], [0], [1], [0, 0, 1, 1], [], []>} : vector<2x1792xf32>, vector<1792x500xf32>, vector<2x500xf32> -> vector<2x500xf32>
    %c0_3 = arith.constant 0 : index
    %c0_4 = arith.constant 0 : index
    %3 = vector.load %arg3[%c0_3, %c0_4] : memref<1x500xf32, #tpu.memory_space<vmem>>, vector<1x500xf32>
    %4 = vector.broadcast %3 : vector<1x500xf32> to vector<2x500xf32>
    %5 = arith.addf %2, %4 : vector<2x500xf32>
    %cst_5 = arith.constant 0.000000e+00 : f32
    %6 = vector.broadcast %cst_5 : f32 to vector<2x500xf32>
    %7 = arith.maximumf %5, %6 : vector<2x500xf32>
    %c0_6 = arith.constant 0 : index
    %c0_7 = arith.constant 0 : index
    %8 = vector.load %arg4[%c0_6, %c0_7] : memref<500x10xf32, #tpu.memory_space<vmem>>, vector<500x10xf32>
    %cst_8 = arith.constant dense<0.000000e+00> : vector<2x10xf32>
    %9 = tpu.matmul %7, %8, %cst_8 {dimension_numbers = #tpu.dot_dimension_numbers<[1], [0], [0], [1], [0, 0, 1, 1], [], []>} : vector<2x500xf32>, vector<500x10xf32>, vector<2x10xf32> -> vector<2x10xf32>
    %c0_9 = arith.constant 0 : index
    %c0_10 = arith.constant 0 : index
    %10 = vector.load %arg5[%c0_9, %c0_10] : memref<1x10xf32, #tpu.memory_space<vmem>>, vector<1x10xf32>
    %11 = vector.broadcast %10 : vector<1x10xf32> to vector<2x10xf32>
    %12 = arith.addf %9, %11 : vector<2x10xf32>
    %cst_11 = arith.constant dense<0xFF800000> : vector<2xf32>
    %13 = vector.multi_reduction <maximumf>, %12, %cst_11 [1] : vector<2x10xf32> to vector<2xf32>
    %14 = vector.shape_cast %13 : vector<2xf32> to vector<2x1xf32>
    %15 = vector.broadcast %14 : vector<2x1xf32> to vector<2x10xf32>
    %16 = arith.subf %12, %15 : vector<2x10xf32>
    %17 = math.exp %16 : vector<2x10xf32>
    %cst_12 = arith.constant dense<0.000000e+00> : vector<2xf32>
    %18 = vector.multi_reduction <add>, %17, %cst_12 [1] : vector<2x10xf32> to vector<2xf32>
    %19 = vector.shape_cast %18 : vector<2xf32> to vector<2x1xf32>
    %20 = math.log %19 : vector<2x1xf32>
    %21 = vector.broadcast %20 : vector<2x1xf32> to vector<2x10xf32>
    %22 = arith.subf %16, %21 : vector<2x10xf32>
    %c0_13 = arith.constant 0 : index
    %c0_14 = arith.constant 0 : index
    %23 = vector.load %arg6[%c0_13, %c0_14] : memref<2x10xf32, #tpu.memory_space<vmem>>, vector<2x10xf32>
    tpu.vector_store %arg6[%c0_13, %c0_14], %22 {strides = array<i32>} : memref<2x10xf32, #tpu.memory_space<vmem>>, vector<2x10xf32>,
    return
  }
  func.func @transform_0(%arg0: i32) -> (i32, i32) {
    %c0_i32 = arith.constant 0 : i32
    %c0_i32_0 = arith.constant 0 : i32
    %c0_i32_1 = arith.constant 0 : i32
    return %c0_i32, %c0_i32_0 : i32, i32
  }
  func.func @transform_1(%arg0: i32) -> (i32, i32) {
    %c0_i32 = arith.constant 0 : i32
    %c0_i32_0 = arith.constant 0 : i32
    %c0_i32_1 = arith.constant 0 : i32
    return %c0_i32, %c0_i32_0 : i32, i32
  }
  func.func @transform_2(%arg0: i32) -> (i32, i32) {
    %c0_i32 = arith.constant 0 : i32
    %c0_i32_0 = arith.constant 0 : i32
    %c0_i32_1 = arith.constant 0 : i32
    return %c0_i32, %c0_i32_0 : i32, i32
  }
  func.func @transform_3(%arg0: i32) -> (i32, i32) {
    %c0_i32 = arith.constant 0 : i32
    %c0_i32_0 = arith.constant 0 : i32
    %c0_i32_1 = arith.constant 0 : i32
    return %c0_i32, %c0_i32_0 : i32, i32
  }
  func.func @transform_4(%arg0: i32) -> (i32, i32) {
    %c0_i32 = arith.constant 0 : i32
    %c0_i32_0 = arith.constant 0 : i32
    %c0_i32_1 = arith.constant 0 : i32
    return %c0_i32, %c0_i32_0 : i32, i32
  }
  func.func @transform_5(%arg0: i32) -> (i32, i32) {
    %c0_i32 = arith.constant 0 : i32
    %c0_i32_0 = arith.constant 0 : i32
    %c0_i32_1 = arith.constant 0 : i32
    return %c0_i32, %c0_i32_0 : i32, i32
  }
}

</mosaic_0001>

<llo_original>
// kernel: cnn_forward.2
$region0: #{cnn_forward.2}
  #allocation0 [shape = 'u32[]', space=smem, size = 0x4, offset = 0x4, fixed_abs, tag = 'smem constant byte address 0x4 - core index']
  #allocation1 [shape = 'u32[144,128]{1,0:T(1,128)}', space=vmem, size = 0x12000, scoped, tag = 'internal scratch']
  #allocation2 [shape = 'f32[520,32]{1,0:T(8,128)}', space=vmem, size = 0x41000, scoped, tag = 'scratch operand']
  %s0 = inlined_call_operand.vmem [shape: f32[4,512,9], index: 0, kind: input, shape index: {}]
  %s1 = inlined_call_operand.vmem [shape: f32[512,1], index: 1, kind: input, shape index: {}]
  %s2 = inlined_call_operand.vmem [shape: f32[9,32], index: 2, kind: input, shape index: {}]
  %s3 = inlined_call_operand.vmem [shape: f32[1,32], index: 3, kind: input, shape index: {}]
  %s4 = inlined_call_operand.vmem [shape: f32[9,32,32], index: 4, kind: input, shape index: {}]
  %s5 = inlined_call_operand.vmem [shape: f32[1,32], index: 5, kind: input, shape index: {}]
  %s6 = inlined_call_operand.vmem [shape: f32[2,56,32], index: 6, kind: output, shape index: {}]
  %s7 = sld [smem:[#allocation0]]
  $region34: #{cnn_forward.2} parent=0
    _
  %s9 = ssub.s32 1, %s7
  %s10 = scalar_select 0, %s9, %s7
  // Predicated region
  $region2: #{cnn_forward.2} parent=0 // pred_check
    _
  $region3: #{cnn_forward.2} parent=0 // pred_check_branch
    %12 = sbr.rel (0) target = $region5
  $region4: #{cnn_forward.2} parent=0 // pred_region
    _
  $region5: #{cnn_forward.2} parent=0 // pred_fallthru
    _
  // Predicated region
  $region6: #{cnn_forward.2} parent=0 // pred_check
    _
  $region7: #{cnn_forward.2} parent=0 // pred_check_branch
    %14 = sbr.rel (0) target = $region9
  $region8: #{cnn_forward.2} parent=0 // pred_region
    _
  $region9: #{cnn_forward.2} parent=0 // pred_fallthru
    _
  // Predicated region
  $region10: #{cnn_forward.2} parent=0 // pred_check
    _
  $region11: #{cnn_forward.2} parent=0 // pred_check_branch
    %16 = sbr.rel (0) target = $region13
  $region12: #{cnn_forward.2} parent=0 // pred_region
    _
  $region13: #{cnn_forward.2} parent=0 // pred_fallthru
    _
  // Predicated region
  $region14: #{cnn_forward.2} parent=0 // pred_check
    _
  $region15: #{cnn_forward.2} parent=0 // pred_check_branch
    %18 = sbr.rel (0) target = $region17
  $region16: #{cnn_forward.2} parent=0 // pred_region
    _
  $region17: #{cnn_forward.2} parent=0 // pred_fallthru
    _
  // Predicated region
  $region18: #{cnn_forward.2} parent=0 // pred_check
    _
  $region19: #{cnn_forward.2} parent=0 // pred_check_branch
    %20 = sbr.rel (0) target = $region21
  $region20: #{cnn_forward.2} parent=0 // pred_region
    _
  $region21: #{cnn_forward.2} parent=0 // pred_fallthru
    _
  // Predicated region
  $region22: #{cnn_forward.2} parent=0 // pred_check
    _
  $region23: #{cnn_forward.2} parent=0 // pred_check_branch
    %22 = sbr.rel (0) target = $region25
  $region24: #{cnn_forward.2} parent=0 // pred_region
    _
  $region25: #{cnn_forward.2} parent=0 // pred_fallthru
    _
  %v23 = vld [vmem:[%s2] sm:$0xff]
  %v24 = vld [vmem:[%s2 + $0x8] sm:$0x1]
  %v25 = vld [vmem:[%s3] sm:$0x1]
  %v26 = vld [vmem:[%s0] sm:$0xff]
  %v27 = vld [vmem:[%s0 + $0x8] sm:$0xff]
  %v28 = vld [vmem:[%s0 + $0x10] sm:$0xff]
  %v29 = vld [vmem:[%s0 + $0x18] sm:$0xff]
  %v30 = vld [vmem:[%s0 + $0x20] sm:$0xff]
  %v31 = vld [vmem:[%s0 + $0x28] sm:$0xff]
  %v32 = vld [vmem:[%s0 + $0x30] sm:$0xff]
  %v33 = vld [vmem:[%s0 + $0x38] sm:$0xff]
  %v34 = vld [vmem:[%s0 + $0x40] sm:$0xff]
  %v35 = vld [vmem:[%s0 + $0x48] sm:$0xff]
  %v36 = vld [vmem:[%s0 + $0x50] sm:$0xff]
  %v37 = vld [vmem:[%s0 + $0x58] sm:$0xff]
  %v38 = vld [vmem:[%s0 + $0x60] sm:$0xff]
  %v39 = vld [vmem:[%s0 + $0x68] sm:$0xff]
  %v40 = vld [vmem:[%s0 + $0x70] sm:$0xff]
  %v41 = vld [vmem:[%s0 + $0x78] sm:$0xff]
  %v42 = vld [vmem:[%s0 + $0x80] sm:$0xff]
  %v43 = vld [vmem:[%s0 + $0x88] sm:$0xff]
  %v44 = vld [vmem:[%s0 + $0x90] sm:$0xff]
  %v45 = vld [vmem:[%s0 + $0x98] sm:$0xff]
  %v46 = vld [vmem:[%s0 + $0xa0] sm:$0xff]
  %v47 = vld [vmem:[%s0 + $0xa8] sm:$0xff]
  %v48 = vld [vmem:[%s0 + $0xb0] sm:$0xff]
  %v49 = vld [vmem:[%s0 + $0xb8] sm:$0xff]
  %v50 = vld [vmem:[%s0 + $0xc0] sm:$0xff]
  %v51 = vld [vmem:[%s0 + $0xc8] sm:$0xff]
  %v52 = vld [vmem:[%s0 + $0xd0] sm:$0xff]
  %v53 = vld [vmem:[%s0 + $0xd8] sm:$0xff]
  %v54 = vld [vmem:[%s0 + $0xe0] sm:$0xff]
  %v55 = vld [vmem:[%s0 + $0xe8] sm:$0xff]
  %v56 = vld [vmem:[%s0 + $0xf0] sm:$0xff]
  %v57 = vld [vmem:[%s0 + $0xf8] sm:$0xff]
  %v58 = vld [vmem:[%s0 + $0x100] sm:$0xff]
  %v59 = vld [vmem:[%s0 + $0x108] sm:$0xff]
  %v60 = vld [vmem:[%s0 + $0x110] sm:$0xff]
  %v61 = vld [vmem:[%s0 + $0x118] sm:$0xff]
  %v62 = vld [vmem:[%s0 + $0x120] sm:$0xff]
  %v63 = vld [vmem:[%s0 + $0x128] sm:$0xff]
  %v64 = vld [vmem:[%s0 + $0x130] sm:$0xff]
  %v65 = vld [vmem:[%s0 + $0x138] sm:$0xff]
  %v66 = vld [vmem:[%s0 + $0x140] sm:$0xff]
  %v67 = vld [vmem:[%s0 + $0x148] sm:$0xff]
  %v68 = vld [vmem:[%s0 + $0x150] sm:$0xff]
  %v69 = vld [vmem:[%s0 + $0x158] sm:$0xff]
  %v70 = vld [vmem:[%s0 + $0x160] sm:$0xff]
  %v71 = vld [vmem:[%s0 + $0x168] sm:$0xff]
  %v72 = vld [vmem:[%s0 + $0x170] sm:$0xff]
  %v73 = vld [vmem:[%s0 + $0x178] sm:$0xff]
  %v74 = vld [vmem:[%s0 + $0x180] sm:$0xff]
  %v75 = vld [vmem:[%s0 + $0x188] sm:$0xff]
  %v76 = vld [vmem:[%s0 + $0x190] sm:$0xff]
  %v77 = vld [vmem:[%s0 + $0x198] sm:$0xff]
  %v78 = vld [vmem:[%s0 + $0x1a0] sm:$0xff]
  %v79 = vld [vmem:[%s0 + $0x1a8] sm:$0xff]
  %v80 = vld [vmem:[%s0 + $0x1b0] sm:$0xff]
  %v81 = vld [vmem:[%s0 + $0x1b8] sm:$0xff]
  %v82 = vld [vmem:[%s0 + $0x1c0] sm:$0xff]
  %v83 = vld [vmem:[%s0 + $0x1c8] sm:$0xff]
  %v84 = vld [vmem:[%s0 + $0x1d0] sm:$0xff]
  %v85 = vld [vmem:[%s0 + $0x1d8] sm:$0xff]
  %v86 = vld [vmem:[%s0 + $0x1e0] sm:$0xff]
  %v87 = vld [vmem:[%s0 + $0x1e8] sm:$0xff]
  %v88 = vld [vmem:[%s0 + $0x1f0] sm:$0xff]
  %v89 = vld [vmem:[%s0 + $0x1f8] sm:$0xff]
  %v91 = vlaneseq
  %v92 = vshrl.u32 %v91, 7
  %v93 = vsub.s32 0, %v92
  %v94 = vrot.slane %v25, %v93
  %vm96 = vcmask 72704
  %v98 = vsel %vm96, %v26, 0
  %v101 = vsel %vm96, %v27, 0
  %v104 = vsel %vm96, %v28, 0
  %v107 = vsel %vm96, %v29, 0
  %v110 = vsel %vm96, %v30, 0
  %v113 = vsel %vm96, %v31, 0
  %v116 = vsel %vm96, %v32, 0
  %v119 = vsel %vm96, %v33, 0
  %v122 = vsel %vm96, %v34, 0
  %v125 = vsel %vm96, %v35, 0
  %v128 = vsel %vm96, %v36, 0
  %v131 = vsel %vm96, %v37, 0
  %v134 = vsel %vm96, %v38, 0
  %v137 = vsel %vm96, %v39, 0
  %v140 = vsel %vm96, %v40, 0
  %v143 = vsel %vm96, %v41, 0
  %v146 = vsel %vm96, %v42, 0
  %v149 = vsel %vm96, %v43, 0
  %v152 = vsel %vm96, %v44, 0
  %v155 = vsel %vm96, %v45, 0
  %v158 = vsel %vm96, %v46, 0
  %v161 = vsel %vm96, %v47, 0
  %v164 = vsel %vm96, %v48, 0
  %v167 = vsel %vm96, %v49, 0
  %v170 = vsel %vm96, %v50, 0
  %v173 = vsel %vm96, %v51, 0
  %v176 = vsel %vm96, %v52, 0
  %v179 = vsel %vm96, %v53, 0
  %v182 = vsel %vm96, %v54, 0
  %v185 = vsel %vm96, %v55, 0
  %v188 = vsel %vm96, %v56, 0
  %v191 = vsel %vm96, %v57, 0
  %v194 = vsel %vm96, %v58, 0
  %v197 = vsel %vm96, %v59, 0
  %v200 = vsel %vm96, %v60, 0
  %v203 = vsel %vm96, %v61, 0
  %v206 = vsel %vm96, %v62, 0
  %v209 = vsel %vm96, %v63, 0
  %v212 = vsel %vm96, %v64, 0
  %v215 = vsel %vm96, %v65, 0
  %v218 = vsel %vm96, %v66, 0
  %v221 = vsel %vm96, %v67, 0
  %v224 = vsel %vm96, %v68, 0
  %v227 = vsel %vm96, %v69, 0
  %v230 = vsel %vm96, %v70, 0
  %v233 = vsel %vm96, %v71, 0
  %v236 = vsel %vm96, %v72, 0
  %v239 = vsel %vm96, %v73, 0
  %v242 = vsel %vm96, %v74, 0
  %v245 = vsel %vm96, %v75, 0
  %v248 = vsel %vm96, %v76, 0
  %v251 = vsel %vm96, %v77, 0
  %v254 = vsel %vm96, %v78, 0
  %v257 = vsel %vm96, %v79, 0
  %v260 = vsel %vm96, %v80, 0
  %v263 = vsel %vm96, %v81, 0
  %v266 = vsel %vm96, %v82, 0
  %v269 = vsel %vm96, %v83, 0
  %v272 = vsel %vm96, %v84, 0
  %v275 = vsel %vm96, %v85, 0
  %v278 = vsel %vm96, %v86, 0
  %v281 = vsel %vm96, %v87, 0
  %v284 = vsel %vm96, %v88, 0
  %v287 = vsel %vm96, %v89, 0
  %vm289 = vcmask 1040384
  %v291 = vsel %vm289, %v24, 0
  %293 = vmatprep.subr.mxu0 0.0
  %294 = vmatpush1.msra.mxu0 %v23
  %295 = vmatprep.subr.mxu0 0.0
  %296 = vmatpush1.msra.mxu0 %v291
  %297 = vmatprep.subr.mxu0 0.0
  %298 = vmatpush1.msra.mxu0 0.0
  %299 = vmatprep.subr.mxu0 0.0
  %300 = vmatpush1.msra.mxu0 0.0
  %301 = vmatprep.subr.mxu0 0.0
  %302 = vmatpush1.msra.mxu0 0.0
  %303 = vmatprep.subr.mxu0 0.0
  %304 = vmatpush1.msra.mxu0 0.0
  %305 = vmatprep.subr.mxu0 0.0
  %306 = vmatpush1.msra.mxu0 0.0
  %307 = vmatprep.subr.mxu0 0.0
  %308 = vmatpush1.msra.mxu0 0.0
  %309 = vmatprep.subr.mxu0 0.0
  %310 = vmatpush1.msra.mxu0 0.0
  %311 = vmatprep.subr.mxu0 0.0
  %312 = vmatpush1.msra.mxu0 0.0
  %313 = vmatprep.subr.mxu0 0.0
  %314 = vmatpush1.msra.mxu0 0.0
  %315 = vmatprep.subr.mxu0 0.0
  %316 = vmatpush1.msra.mxu0 0.0
  %317 = vmatprep.subr.mxu0 0.0
  %318 = vmatpush1.msra.mxu0 0.0
  %319 = vmatprep.subr.mxu0 0.0
  %320 = vmatpush1.msra.mxu0 0.0
  %321 = vmatprep.subr.mxu0 0.0
  %322 = vmatpush1.msra.mxu0 0.0
  %323 = vmatprep.subr.mxu0 0.0
  %324 = vmatpush1.msra.mxu0 0.0
  %325 = vmatprep.subr.mxu0 0.0
  %326 = vmatpush1.msra.mxu0 0.0
  %327 = vmatprep.subr.mxu0 0.0
  %328 = vmatpush1.msra.mxu0 0.0
  %329 = vmatprep.subr.mxu0 0.0
  %330 = vmatpush1.msra.mxu0 0.0
  %331 = vmatprep.subr.mxu0 0.0
  %332 = vmatpush1.msra.mxu0 0.0
  %333 = vmatprep.subr.mxu0 0.0
  %334 = vmatpush1.msra.mxu0 0.0
  %335 = vmatprep.subr.mxu0 0.0
  %336 = vmatpush1.msra.mxu0 0.0
  %337 = vmatprep.subr.mxu0 0.0
  %338 = vmatpush1.msra.mxu0 0.0
  %339 = vmatprep.subr.mxu0 0.0
  %340 = vmatpush1.msra.mxu0 0.0
  %341 = vmatprep.subr.mxu0 0.0
  %342 = vmatpush1.msra.mxu0 0.0
  %343 = vmatprep.subr.mxu0 0.0
  %344 = vmatpush1.msra.mxu0 0.0
  %345 = vmatprep.subr.mxu0 0.0
  %346 = vmatpush1.msra.mxu0 0.0
  %347 = vmatprep.subr.mxu0 0.0
  %348 = vmatpush1.msra.mxu0 0.0
  %349 = vmatprep.subr.mxu0 0.0
  %350 = vmatpush1.msra.mxu0 0.0
  %351 = vmatprep.subr.mxu0 0.0
  %352 = vmatpush1.msra.mxu0 0.0
  %353 = vmatprep.subr.mxu0 0.0
  %354 = vmatpush1.msra.mxu0 0.0
  %355 = vmatprep.subr.mxu0 0.0
  %356 = vmatpush1.msra.mxu0 0.0
  %357 = vmatprep.mubr.f32.mxu0 0.0
  %358 = vmatmul.mubr.f32.gmra.mrb[0].mxu0 %v98
  %v359 = vpop.f32.mrb[0].mxu0
  %v360 = vadd.f32 %v94, %v359
  %v361 = vpop.f32.mrb[0].mxu0
  %362 = vmatprep.mubr.f32.mxu0 0.0
  %363 = vmatmul.mubr.f32.gmra.mrb[0].mxu0 %v101
  %v364 = vpop.f32.mrb[0].mxu0
  %v365 = vadd.f32 %v94, %v364
  %v366 = vpop.f32.mrb[0].mxu0
  %367 = vmatprep.mubr.f32.mxu0 0.0
  %368 = vmatmul.mubr.f32.gmra.mrb[0].mxu0 %v104
  %v369 = vpop.f32.mrb[0].mxu0
  %v370 = vadd.f32 %v94, %v369
  %v371 = vpop.f32.mrb[0].mxu0
  %372 = vmatprep.mubr.f32.mxu0 0.0
  %373 = vmatmul.mubr.f32.gmra.mrb[0].mxu0 %v107
  %v374 = vpop.f32.mrb[0].mxu0
  %v375 = vadd.f32 %v94, %v374
  %v376 = vpop.f32.mrb[0].mxu0
  %377 = vmatprep.mubr.f32.mxu0 0.0
  %378 = vmatmul.mubr.f32.gmra.mrb[0].mxu0 %v110
  %v379 = vpop.f32.mrb[0].mxu0
  %v380 = vadd.f32 %v94, %v379
  %v381 = vpop.f32.mrb[0].mxu0
  %382 = vmatprep.mubr.f32.mxu0 0.0
  %383 = vmatmul.mubr.f32.gmra.mrb[0].mxu0 %v113
  %v384 = vpop.f32.mrb[0].mxu0
  %v385 = vadd.f32 %v94, %v384
  %v386 = vpop.f32.mrb[0].mxu0
  %387 = vmatprep.mubr.f32.mxu0 0.0
  %388 = vmatmul.mubr.f32.gmra.mrb[0].mxu0 %v116
  %v389 = vpop.f32.mrb[0].mxu0
  %v390 = vadd.f32 %v94, %v389
  %v391 = vpop.f32.mrb[0].mxu0
  %392 = vmatprep.mubr.f32.mxu0 0.0
  %393 = vmatmul.mubr.f32.gmra.mrb[0].mxu0 %v119
  %v394 = vpop.f32.mrb[0].mxu0
  %v395 = vadd.f32 %v94, %v394
  %v396 = vpop.f32.mrb[0].mxu0
  %397 = vmatprep.mubr.f32.mxu0 0.0
  %398 = vmatmul.mubr.f32.gmra.mrb[0].mxu0 %v122
  %v399 = vpop.f32.mrb[0].mxu0
  %v400 = vadd.f32 %v94, %v399
  %v401 = vpop.f32.mrb[0].mxu0
  %402 = vmatprep.mubr.f32.mxu0 0.0
  %403 = vmatmul.mubr.f32.gmra.mrb[0].mxu0 %v125
  %v404 = vpop.f32.mrb[0].mxu0
  %v405 = vadd.f32 %v94, %v404
  %v406 = vpop.f32.mrb[0].mxu0
  %407 = vmatprep.mubr.f32.mxu0 0.0
  %408 = vmatmul.mubr.f32.gmra.mrb[0].mxu0 %v128
  %v409 = vpop.f32.mrb[0].mxu0
  %v410 = vadd.f32 %v94, %v409
  %v411 = vpop.f32.mrb[0].mxu0
  %412 = vmatprep.mubr.f32.mxu0 0.0
  %413 = vmatmul.mubr.f32.gmra.mrb[0].mxu0 %v131
  %v414 = vpop.f32.mrb[0].mxu0
  %v415 = vadd.f32 %v94, %v414
  %v416 = vpop.f32.mrb[0].mxu0
  %417 = vmatprep.mubr.f32.mxu0 0.0
  %418 = vmatmul.mubr.f32.gmra.mrb[0].mxu0 %v134
  %v419 = vpop.f32.mrb[0].mxu0
  %v420 = vadd.f32 %v94, %v419
  %v421 = vpop.f32.mrb[0].mxu0
  %422 = vmatprep.mubr.f32.mxu0 0.0
  %423 = vmatmul.mubr.f32.gmra.mrb[0].mxu0 %v137
  %v424 = vpop.f32.mrb[0].mxu0
  %v425 = vadd.f32 %v94, %v424
  %v426 = vpop.f32.mrb[0].mxu0
  %427 = vmatprep.mubr.f32.mxu0 0.0
  %428 = vmatmul.mubr.f32.gmra.mrb[0].mxu0 %v140
  %v429 = vpop.f32.mrb[0].mxu0
  %v430 = vadd.f32 %v94, %v429
  %v431 = vpop.f32.mrb[0].mxu0
  %432 = vmatprep.mubr.f32.mxu0 0.0
  %433 = vmatmul.mubr.f32.gmra.mrb[0].mxu0 %v143
  %v434 = vpop.f32.mrb[0].mxu0
  %v435 = vadd.f32 %v94, %v434
  %v436 = vpop.f32.mrb[0].mxu0
  %437 = vmatprep.mubr.f32.mxu0 0.0
  %438 = vmatmul.mubr.f32.gmra.mrb[0].mxu0 %v146
  %v439 = vpop.f32.mrb[0].mxu0
  %v440 = vadd.f32 %v94, %v439
  %v441 = vpop.f32.mrb[0].mxu0
  %442 = vmatprep.mubr.f32.mxu0 0.0
  %443 = vmatmul.mubr.f32.gmra.mrb[0].mxu0 %v149
  %v444 = vpop.f32.mrb[0].mxu0
  %v445 = vadd.f32 %v94, %v444
  %v446 = vpop.f32.mrb[0].mxu0
  %447 = vmatprep.mubr.f32.mxu0 0.0
  %448 = vmatmul.mubr.f32.gmra.mrb[0].mxu0 %v152
  %v449 = vpop.f32.mrb[0].mxu0
  %v450 = vadd.f32 %v94, %v449
  %v451 = vpop.f32.mrb[0].mxu0
  %452 = vmatprep.mubr.f32.mxu0 0.0
  %453 = vmatmul.mubr.f32.gmra.mrb[0].mxu0 %v155
  %v454 = vpop.f32.mrb[0].mxu0
  %v455 = vadd.f32 %v94, %v454
  %v456 = vpop.f32.mrb[0].mxu0
  %457 = vmatprep.mubr.f32.mxu0 0.0
  %458 = vmatmul.mubr.f32.gmra.mrb[0].mxu0 %v158
  %v459 = vpop.f32.mrb[0].mxu0
  %v460 = vadd.f32 %v94, %v459
  %v461 = vpop.f32.mrb[0].mxu0
  %462 = vmatprep.mubr.f32.mxu0 0.0
  %463 = vmatmul.mubr.f32.gmra.mrb[0].mxu0 %v161
  %v464 = vpop.f32.mrb[0].mxu0
  %v465 = vadd.f32 %v94, %v464
  %v466 = vpop.f32.mrb[0].mxu0
  %467 = vmatprep.mubr.f32.mxu0 0.0
  %468 = vmatmul.mubr.f32.gmra.mrb[0].mxu0 %v164
  %v469 = vpop.f32.mrb[0].mxu0
  %v470 = vadd.f32 %v94, %v469
  %v471 = vpop.f32.mrb[0].mxu0
  %472 = vmatprep.mubr.f32.mxu0 0.0
  %473 = vmatmul.mubr.f32.gmra.mrb[0].mxu0 %v167
  %v474 = vpop.f32.mrb[0].mxu0
  %v475 = vadd.f32 %v94, %v474
  %v476 = vpop.f32.mrb[0].mxu0
  %477 = vmatprep.mubr.f32.mxu0 0.0
  %478 = vmatmul.mubr.f32.gmra.mrb[0].mxu0 %v170
  %v479 = vpop.f32.mrb[0].mxu0
  %v480 = vadd.f32 %v94, %v479
  %v481 = vpop.f32.mrb[0].mxu0
  %482 = vmatprep.mubr.f32.mxu0 0.0
  %483 = vmatmul.mubr.f32.gmra.mrb[0].mxu0 %v173
  %v484 = vpop.f32.mrb[0].mxu0
  %v485 = vadd.f32 %v94, %v484
  %v486 = vpop.f32.mrb[0].mxu0
  %487 = vmatprep.mubr.f32.mxu0 0.0
  %488 = vmatmul.mubr.f32.gmra.mrb[0].mxu0 %v176
  %v489 = vpop.f32.mrb[0].mxu0
  %v490 = vadd.f32 %v94, %v489
  %v491 = vpop.f32.mrb[0].mxu0
  %492 = vmatprep.mubr.f32.mxu0 0.0
  %493 = vmatmul.mubr.f32.gmra.mrb[0].mxu0 %v179
  %v494 = vpop.f32.mrb[0].mxu0
  %v495 = vadd.f32 %v94, %v494
  %v496 = vpop.f32.mrb[0].mxu0
  %497 = vmatprep.mubr.f32.mxu0 0.0
  %498 = vmatmul.mubr.f32.gmra.mrb[0].mxu0 %v182
  %v499 = vpop.f32.mrb[0].mxu0
  %v500 = vadd.f32 %v94, %v499
  %v501 = vpop.f32.mrb[0].mxu0
  %502 = vmatprep.mubr.f32.mxu0 0.0
  %503 = vmatmul.mubr.f32.gmra.mrb[0].mxu0 %v185
  %v504 = vpop.f32.mrb[0].mxu0
  %v505 = vadd.f32 %v94, %v504
  %v506 = vpop.f32.mrb[0].mxu0
  %507 = vmatprep.mubr.f32.mxu0 0.0
  %508 = vmatmul.mubr.f32.gmra.mrb[0].mxu0 %v188
  %v509 = vpop.f32.mrb[0].mxu0
  %v510 = vadd.f32 %v94, %v509
  %v511 = vpop.f32.mrb[0].mxu0
  %512 = vmatprep.mubr.f32.mxu0 0.0
  %513 = vmatmul.mubr.f32.gmra.mrb[0].mxu0 %v191
  %v514 = vpop.f32.mrb[0].mxu0
  %v515 = vadd.f32 %v94, %v514
  %v516 = vpop.f32.mrb[0].mxu0
  %517 = vmatprep.mubr.f32.mxu0 0.0
  %518 = vmatmul.mubr.f32.gmra.mrb[0].mxu0 %v194
  %v519 = vpop.f32.mrb[0].mxu0
  %v520 = vadd.f32 %v94, %v519
  %v521 = vpop.f32.mrb[0].mxu0
  %522 = vmatprep.mubr.f32.mxu0 0.0
  %523 = vmatmul.mubr.f32.gmra.mrb[0].mxu0 %v197
  %v524 = vpop.f32.mrb[0].mxu0
  %v525 = vadd.f32 %v94, %v524
  %v526 = vpop.f32.mrb[0].mxu0
  %527 = vmatprep.mubr.f32.mxu0 0.0
  %528 = vmatmul.mubr.f32.gmra.mrb[0].mxu0 %v200
  %v529 = vpop.f32.mrb[0].mxu0
  %v530 = vadd.f32 %v94, %v529
  %v531 = vpop.f32.mrb[0].mxu0
  %532 = vmatprep.mubr.f32.mxu0 0.0
  %533 = vmatmul.mubr.f32.gmra.mrb[0].mxu0 %v203
  %v534 = vpop.f32.mrb[0].mxu0
  %v535 = vadd.f32 %v94, %v534
  %v536 = vpop.f32.mrb[0].mxu0
  %537 = vmatprep.mubr.f32.mxu0 0.0
  %538 = vmatmul.mubr.f32.gmra.mrb[0].mxu0 %v206
  %v539 = vpop.f32.mrb[0].mxu0
  %v540 = vadd.f32 %v94, %v539
  %v541 = vpop.f32.mrb[0].mxu0
  %542 = vmatprep.mubr.f32.mxu0 0.0
  %543 = vmatmul.mubr.f32.gmra.mrb[0].mxu0 %v209
  %v544 = vpop.f32.mrb[0].mxu0
  %v545 = vadd.f32 %v94, %v544
  %v546 = vpop.f32.mrb[0].mxu0
  %547 = vmatprep.mubr.f32.mxu0 0.0
  %548 = vmatmul.mubr.f32.gmra.mrb[0].mxu0 %v212
  %v549 = vpop.f32.mrb[0].mxu0
  %v550 = vadd.f32 %v94, %v549
  %v551 = vpop.f32.mrb[0].mxu0
  %552 = vmatprep.mubr.f32.mxu0 0.0
  %553 = vmatmul.mubr.f32.gmra.mrb[0].mxu0 %v215
  %v554 = vpop.f32.mrb[0].mxu0
  %v555 = vadd.f32 %v94, %v554
  %v556 = vpop.f32.mrb[0].mxu0
  %557 = vmatprep.mubr.f32.mxu0 0.0
  %558 = vmatmul.mubr.f32.gmra.mrb[0].mxu0 %v218
  %v559 = vpop.f32.mrb[0].mxu0
  %v560 = vadd.f32 %v94, %v559
  %v561 = vpop.f32.mrb[0].mxu0
  %562 = vmatprep.mubr.f32.mxu0 0.0
  %563 = vmatmul.mubr.f32.gmra.mrb[0].mxu0 %v221
  %v564 = vpop.f32.mrb[0].mxu0
  %v565 = vadd.f32 %v94, %v564
  %v566 = vpop.f32.mrb[0].mxu0
  %567 = vmatprep.mubr.f32.mxu0 0.0
  %568 = vmatmul.mubr.f32.gmra.mrb[0].mxu0 %v224
  %v569 = vpop.f32.mrb[0].mxu0
  %v570 = vadd.f32 %v94, %v569
  %v571 = vpop.f32.mrb[0].mxu0
  %572 = vmatprep.mubr.f32.mxu0 0.0
  %573 = vmatmul.mubr.f32.gmra.mrb[0].mxu0 %v227
  %v574 = vpop.f32.mrb[0].mxu0
  %v575 = vadd.f32 %v94, %v574
  %v576 = vpop.f32.mrb[0].mxu0
  %577 = vmatprep.mubr.f32.mxu0 0.0
  %578 = vmatmul.mubr.f32.gmra.mrb[0].mxu0 %v230
  %v579 = vpop.f32.mrb[0].mxu0
  %v580 = vadd.f32 %v94, %v579
  %v581 = vpop.f32.mrb[0].mxu0
  %582 = vmatprep.mubr.f32.mxu0 0.0
  %583 = vmatmul.mubr.f32.gmra.mrb[0].mxu0 %v233
  %v584 = vpop.f32.mrb[0].mxu0
  %v585 = vadd.f32 %v94, %v584
  %v586 = vpop.f32.mrb[0].mxu0
  %587 = vmatprep.mubr.f32.mxu0 0.0
  %588 = vmatmul.mubr.f32.gmra.mrb[0].mxu0 %v236
  %v589 = vpop.f32.mrb[0].mxu0
  %v590 = vadd.f32 %v94, %v589
  %v591 = vpop.f32.mrb[0].mxu0
  %592 = vmatprep.mubr.f32.mxu0 0.0
  %593 = vmatmul.mubr.f32.gmra.mrb[0].mxu0 %v239
  %v594 = vpop.f32.mrb[0].mxu0
  %v595 = vadd.f32 %v94, %v594
  %v596 = vpop.f32.mrb[0].mxu0
  %597 = vmatprep.mubr.f32.mxu0 0.0
  %598 = vmatmul.mubr.f32.gmra.mrb[0].mxu0 %v242
  %v599 = vpop.f32.mrb[0].mxu0
  %v600 = vadd.f32 %v94, %v599
  %v601 = vpop.f32.mrb[0].mxu0
  %602 = vmatprep.mubr.f32.mxu0 0.0
  %603 = vmatmul.mubr.f32.gmra.mrb[0].mxu0 %v245
  %v604 = vpop.f32.mrb[0].mxu0
  %v605 = vadd.f32 %v94, %v604
  %v606 = vpop.f32.mrb[0].mxu0
  %607 = vmatprep.mubr.f32.mxu0 0.0
  %608 = vmatmul.mubr.f32.gmra.mrb[0].mxu0 %v248
  %v609 = vpop.f32.mrb[0].mxu0
  %v610 = vadd.f32 %v94, %v609
  %v611 = vpop.f32.mrb[0].mxu0
  %612 = vmatprep.mubr.f32.mxu0 0.0
  %613 = vmatmul.mubr.f32.gmra.mrb[0].mxu0 %v251
  %v614 = vpop.f32.mrb[0].mxu0
  %v615 = vadd.f32 %v94, %v614
  %v616 = vpop.f32.mrb[0].mxu0
  %617 = vmatprep.mubr.f32.mxu0 0.0
  %618 = vmatmul.mubr.f32.gmra.mrb[0].mxu0 %v254
  %v619 = vpop.f32.mrb[0].mxu0
  %v620 = vadd.f32 %v94, %v619
  %v621 = vpop.f32.mrb[0].mxu0
  %622 = vmatprep.mubr.f32.mxu0 0.0
  %623 = vmatmul.mubr.f32.gmra.mrb[0].mxu0 %v257
  %v624 = vpop.f32.mrb[0].mxu0
  %v625 = vadd.f32 %v94, %v624
  %v626 = vpop.f32.mrb[0].mxu0
  %627 = vmatprep.mubr.f32.mxu0 0.0
  %628 = vmatmul.mubr.f32.gmra.mrb[0].mxu0 %v260
  %v629 = vpop.f32.mrb[0].mxu0
  %v630 = vadd.f32 %v94, %v629
  %v631 = vpop.f32.mrb[0].mxu0
  %632 = vmatprep.mubr.f32.mxu0 0.0
  %633 = vmatmul.mubr.f32.gmra.mrb[0].mxu0 %v263
  %v634 = vpop.f32.mrb[0].mxu0
  %v635 = vadd.f32 %v94, %v634
  %v636 = vpop.f32.mrb[0].mxu0
  %637 = vmatprep.mubr.f32.mxu0 0.0
  %638 = vmatmul.mubr.f32.gmra.mrb[0].mxu0 %v266
  %v639 = vpop.f32.mrb[0].mxu0
  %v640 = vadd.f32 %v94, %v639
  %v641 = vpop.f32.mrb[0].mxu0
  %642 = vmatprep.mubr.f32.mxu0 0.0
  %643 = vmatmul.mubr.f32.gmra.mrb[0].mxu0 %v269
  %v644 = vpop.f32.mrb[0].mxu0
  %v645 = vadd.f32 %v94, %v644
  %v646 = vpop.f32.mrb[0].mxu0
  %647 = vmatprep.mubr.f32.mxu0 0.0
  %648 = vmatmul.mubr.f32.gmra.mrb[0].mxu0 %v272
  %v649 = vpop.f32.mrb[0].mxu0
  %v650 = vadd.f32 %v94, %v649
  %v651 = vpop.f32.mrb[0].mxu0
  %652 = vmatprep.mubr.f32.mxu0 0.0
  %653 = vmatmul.mubr.f32.gmra.mrb[0].mxu0 %v275
  %v654 = vpop.f32.mrb[0].mxu0
  %v655 = vadd.f32 %v94, %v654
  %v656 = vpop.f32.mrb[0].mxu0
  %657 = vmatprep.mubr.f32.mxu0 0.0
  %658 = vmatmul.mubr.f32.gmra.mrb[0].mxu0 %v278
  %v659 = vpop.f32.mrb[0].mxu0
  %v660 = vadd.f32 %v94, %v659
  %v661 = vpop.f32.mrb[0].mxu0
  %662 = vmatprep.mubr.f32.mxu0 0.0
  %663 = vmatmul.mubr.f32.gmra.mrb[0].mxu0 %v281
  %v664 = vpop.f32.mrb[0].mxu0
  %v665 = vadd.f32 %v94, %v664
  %v666 = vpop.f32.mrb[0].mxu0
  %667 = vmatprep.mubr.f32.mxu0 0.0
  %668 = vmatmul.mubr.f32.gmra.mrb[0].mxu0 %v284
  %v669 = vpop.f32.mrb[0].mxu0
  %v670 = vadd.f32 %v94, %v669
  %v671 = vpop.f32.mrb[0].mxu0
  %672 = vmatprep.mubr.f32.mxu0 0.0
  %673 = vmatmul.mubr.f32.gmra.mrb[0].mxu0 %v287
  %v674 = vpop.f32.mrb[0].mxu0
  %v675 = vadd.f32 %v94, %v674
  %v676 = vpop.f32.mrb[0].mxu0
  %677 = vdwg.mxu0
  %v678 = vmax.f32 %v360, 0.0
  %v679 = vmax.f32 %v365, 0.0
  %v680 = vmax.f32 %v370, 0.0
  %v681 = vmax.f32 %v375, 0.0
  %v682 = vmax.f32 %v380, 0.0
  %v683 = vmax.f32 %v385, 0.0
  %v684 = vmax.f32 %v390, 0.0
  %v685 = vmax.f32 %v395, 0.0
  %v686 = vmax.f32 %v400, 0.0
  %v687 = vmax.f32 %v405, 0.0
  %v688 = vmax.f32 %v410, 0.0
  %v689 = vmax.f32 %v415, 0.0
  %v690 = vmax.f32 %v420, 0.0
  %v691 = vmax.f32 %v425, 0.0
  %v692 = vmax.f32 %v430, 0.0
  %v693 = vmax.f32 %v435, 0.0
  %v694 = vmax.f32 %v440, 0.0
  %v695 = vmax.f32 %v445, 0.0
  %v696 = vmax.f32 %v450, 0.0
  %v697 = vmax.f32 %v455, 0.0
  %v698 = vmax.f32 %v460, 0.0
  %v699 = vmax.f32 %v465, 0.0
  %v700 = vmax.f32 %v470, 0.0
  %v701 = vmax.f32 %v475, 0.0
  %v702 = vmax.f32 %v480, 0.0
  %v703 = vmax.f32 %v485, 0.0
  %v704 = vmax.f32 %v490, 0.0
  %v705 = vmax.f32 %v495, 0.0
  %v706 = vmax.f32 %v500, 0.0
  %v707 = vmax.f32 %v505, 0.0
  %v708 = vmax.f32 %v510, 0.0
  %v709 = vmax.f32 %v515, 0.0
  %v710 = vmax.f32 %v520, 0.0
  %v711 = vmax.f32 %v525, 0.0
  %v712 = vmax.f32 %v530, 0.0
  %v713 = vmax.f32 %v535, 0.0
  %v714 = vmax.f32 %v540, 0.0
  %v715 = vmax.f32 %v545, 0.0
  %v716 = vmax.f32 %v550, 0.0
  %v717 = vmax.f32 %v555, 0.0
  %v718 = vmax.f32 %v560, 0.0
  %v719 = vmax.f32 %v565, 0.0
  %v720 = vmax.f32 %v570, 0.0
  %v721 = vmax.f32 %v575, 0.0
  %v722 = vmax.f32 %v580, 0.0
  %v723 = vmax.f32 %v585, 0.0
  %v724 = vmax.f32 %v590, 0.0
  %v725 = vmax.f32 %v595, 0.0
  %v726 = vmax.f32 %v600, 0.0
  %v727 = vmax.f32 %v605, 0.0
  %v728 = vmax.f32 %v610, 0.0
  %v729 = vmax.f32 %v615, 0.0
  %v730 = vmax.f32 %v620, 0.0
  %v731 = vmax.f32 %v625, 0.0
  %v732 = vmax.f32 %v630, 0.0
  %v733 = vmax.f32 %v635, 0.0
  %v734 = vmax.f32 %v640, 0.0
  %v735 = vmax.f32 %v645, 0.0
  %v736 = vmax.f32 %v650, 0.0
  %v737 = vmax.f32 %v655, 0.0
  %v738 = vmax.f32 %v660, 0.0
  %v739 = vmax.f32 %v665, 0.0
  %v740 = vmax.f32 %v670, 0.0
  %v741 = vmax.f32 %v675, 0.0
  %s742 = scalar_lea.vmem %s0, 512
  %v743 = vld [vmem:[%s742] sm:$0xff]
  %v744 = vld [vmem:[%s742 + $0x8] sm:$0xff]
  %v745 = vld [vmem:[%s742 + $0x10] sm:$0xff]
  %v746 = vld [vmem:[%s742 + $0x18] sm:$0xff]
  %v747 = vld [vmem:[%s742 + $0x20] sm:$0xff]
  %v748 = vld [vmem:[%s742 + $0x28] sm:$0xff]
  %v749 = vld [vmem:[%s742 + $0x30] sm:$0xff]
  %v750 = vld [vmem:[%s742 + $0x38] sm:$0xff]
  %v751 = vld [vmem:[%s742 + $0x40] sm:$0xff]
  %v752 = vld [vmem:[%s742 + $0x48] sm:$0xff]
  %v753 = vld [vmem:[%s742 + $0x50] sm:$0xff]
  %v754 = vld [vmem:[%s742 + $0x58] sm:$0xff]
  %v755 = vld [vmem:[%s742 + $0x60] sm:$0xff]
  %v756 = vld [vmem:[%s742 + $0x68] sm:$0xff]
  %v757 = vld [vmem:[%s742 + $0x70] sm:$0xff]
  %v758 = vld [vmem:[%s742 + $0x78] sm:$0xff]
  %v759 = vld [vmem:[%s742 + $0x80] sm:$0xff]
  %v760 = vld [vmem:[%s742 + $0x88] sm:$0xff]
  %v761 = vld [vmem:[%s742 + $0x90] sm:$0xff]
  %v762 = vld [vmem:[%s742 + $0x98] sm:$0xff]
  %v763 = vld [vmem:[%s742 + $0xa0] sm:$0xff]
  %v764 = vld [vmem:[%s742 + $0xa8] sm:$0xff]
  %v765 = vld [vmem:[%s742 + $0xb0] sm:$0xff]
  %v766 = vld [vmem:[%s742 + $0xb8] sm:$0xff]
  %v767 = vld [vmem:[%s742 + $0xc0] sm:$0xff]
  %v768 = vld [vmem:[%s742 + $0xc8] sm:$0xff]
  %v769 = vld [vmem:[%s742 + $0xd0] sm:$0xff]
  %v770 = vld [vmem:[%s742 + $0xd8] sm:$0xff]
  %v771 = vld [vmem:[%s742 + $0xe0] sm:$0xff]
  %v772 = vld [vmem:[%s742 + $0xe8] sm:$0xff]
  %v773 = vld [vmem:[%s742 + $0xf0] sm:$0xff]
  %v774 = vld [vmem:[%s742 + $0xf8] sm:$0xff]
  %v775 = vld [vmem:[%s742 + $0x100] sm:$0xff]
  %v776 = vld [vmem:[%s742 + $0x108] sm:$0xff]
  %v777 = vld [vmem:[%s742 + $0x110] sm:$0xff]
  %v778 = vld [vmem:[%s742 + $0x118] sm:$0xff]
  %v779 = vld [vmem:[%s742 + $0x120] sm:$0xff]
  %v780 = vld [vmem:[%s742 + $0x128] sm:$0xff]
  %v781 = vld [vmem:[%s742 + $0x130] sm:$0xff]
  %v782 = vld [vmem:[%s742 + $0x138] sm:$0xff]
  %v783 = vld [vmem:[%s742 + $0x140] sm:$0xff]
  %v784 = vld [vmem:[%s742 + $0x148] sm:$0xff]
  %v785 = vld [vmem:[%s742 + $0x150] sm:$0xff]
  %v786 = vld [vmem:[%s742 + $0x158] sm:$0xff]
  %v787 = vld [vmem:[%s742 + $0x160] sm:$0xff]
  %v788 = vld [vmem:[%s742 + $0x168] sm:$0xff]
  %v789 = vld [vmem:[%s742 + $0x170] sm:$0xff]
  %v790 = vld [vmem:[%s742 + $0x178] sm:$0xff]
  %v791 = vld [vmem:[%s742 + $0x180] sm:$0xff]
  %v792 = vld [vmem:[%s742 + $0x188] sm:$0xff]
  %v793 = vld [vmem:[%s742 + $0x190] sm:$0xff]
  %v794 = vld [vmem:[%s742 + $0x198] sm:$0xff]
  %v795 = vld [vmem:[%s742 + $0x1a0] sm:$0xff]
  %v796 = vld [vmem:[%s742 + $0x1a8] sm:$0xff]
  %v797 = vld [vmem:[%s742 + $0x1b0] sm:$0xff]
  %v798 = vld [vmem:[%s742 + $0x1b8] sm:$0xff]
  %v799 = vld [vmem:[%s742 + $0x1c0] sm:$0xff]
  %v800 = vld [vmem:[%s742 + $0x1c8] sm:$0xff]
  %v801 = vld [vmem:[%s742 + $0x1d0] sm:$0xff]
  %v802 = vld [vmem:[%s742 + $0x1d8] sm:$0xff]
  %v803 = vld [vmem:[%s742 + $0x1e0] sm:$0xff]
  %v804 = vld [vmem:[%s742 + $0x1e8] sm:$0xff]
  %v805 = vld [vmem:[%s742 + $0x1f0] sm:$0xff]
  %v806 = vld [vmem:[%s742 + $0x1f8] sm:$0xff]
  %v808 = vsel %vm96, %v743, 0
  %v811 = vsel %vm96, %v744, 0
  %v814 = vsel %vm96, %v745, 0
  %v817 = vsel %vm96, %v746, 0
  %v820 = vsel %vm96, %v747, 0
  %v823 = vsel %vm96, %v748, 0
  %v826 = vsel %vm96, %v749, 0
  %v829 = vsel %vm96, %v750, 0
  %v832 = vsel %vm96, %v751, 0
  %v835 = vsel %vm96, %v752, 0
  %v838 = vsel %vm96, %v753, 0
  %v841 = vsel %vm96, %v754, 0
  %v844 = vsel %vm96, %v755, 0
  %v847 = vsel %vm96, %v756, 0
  %v850 = vsel %vm96, %v757, 0
  %v853 = vsel %vm96, %v758, 0
  %v856 = vsel %vm96, %v759, 0
  %v859 = vsel %vm96, %v760, 0
  %v862 = vsel %vm96, %v761, 0
  %v865 = vsel %vm96, %v762, 0
  %v868 = vsel %vm96, %v763, 0
  %v871 = vsel %vm96, %v764, 0
  %v874 = vsel %vm96, %v765, 0
  %v877 = vsel %vm96, %v766, 0
  %v880 = vsel %vm96, %v767, 0
  %v883 = vsel %vm96, %v768, 0
  %v886 = vsel %vm96, %v769, 0
  %v889 = vsel %vm96, %v770, 0
  %v892 = vsel %vm96, %v771, 0
  %v895 = vsel %vm96, %v772, 0
  %v898 = vsel %vm96, %v773, 0
  %v901 = vsel %vm96, %v774, 0
  %v904 = vsel %vm96, %v775, 0
  %v907 = vsel %vm96, %v776, 0
  %v910 = vsel %vm96, %v777, 0
  %v913 = vsel %vm96, %v778, 0
  %v916 = vsel %vm96, %v779, 0
  %v919 = vsel %vm96, %v780, 0
  %v922 = vsel %vm96, %v781, 0
  %v925 = vsel %vm96, %v782, 0
  %v928 = vsel %vm96, %v783, 0
  %v931 = vsel %vm96, %v784, 0
  %v934 = vsel %vm96, %v785, 0
  %v937 = vsel %vm96, %v786, 0
  %v940 = vsel %vm96, %v787, 0
  %v943 = vsel %vm96, %v788, 0
  %v946 = vsel %vm96, %v789, 0
  %v949 = vsel %vm96, %v790, 0
  %v952 = vsel %vm96, %v791, 0
  %v955 = vsel %vm96, %v792, 0
  %v958 = vsel %vm96, %v793, 0
  %v961 = vsel %vm96, %v794, 0
  %v964 = vsel %vm96, %v795, 0
  %v967 = vsel %vm96, %v796, 0
  %v970 = vsel %vm96, %v797, 0
  %v973 = vsel %vm96, %v798, 0
  %v976 = vsel %vm96, %v799, 0
  %v979 = vsel %vm96, %v800, 0
  %v982 = vsel %vm96, %v801, 0
  %v985 = vsel %vm96, %v802, 0
  %v988 = vsel %vm96, %v803, 0
  %v991 = vsel %vm96, %v804, 0
  %v994 = vsel %vm96, %v805, 0
  %v997 = vsel %vm96, %v806, 0
  %999 = vmatprep.subr.mxu0 0.0
  %1000 = vmatpush1.msra.mxu0 %v23
  %1001 = vmatprep.subr.mxu0 0.0
  %1002 = vmatpush1.msra.mxu0 %v291
  %1003 = vmatprep.subr.mxu0 0.0
  %1004 = vmatpush1.msra.mxu0 0.0
  %1005 = vmatprep.subr.mxu0 0.0
  %1006 = vmatpush1.msra.mxu0 0.0
  %1007 = vmatprep.subr.mxu0 0.0
  %1008 = vmatpush1.msra.mxu0 0.0
  %1009 = vmatprep.subr.mxu0 0.0
  %1010 = vmatpush1.msra.mxu0 0.0
  %1011 = vmatprep.subr.mxu0 0.0
  %1012 = vmatpush1.msra.mxu0 0.0
  %1013 = vmatprep.subr.mxu0 0.0
  %1014 = vmatpush1.msra.mxu0 0.0
  %1015 = vmatprep.subr.mxu0 0.0
  %1016 = vmatpush1.msra.mxu0 0.0
  %1017 = vmatprep.subr.mxu0 0.0
  %1018 = vmatpush1.msra.mxu0 0.0
  %1019 = vmatprep.subr.mxu0 0.0
  %1020 = vmatpush1.msra.mxu0 0.0
  %1021 = vmatprep.subr.mxu0 0.0
  %1022 = vmatpush1.msra.mxu0 0.0
  %1023 = vmatprep.subr.mxu0 0.0
  %1024 = vmatpush1.msra.mxu0 0.0
  %1025 = vmatprep.subr.mxu0 0.0
  %1026 = vmatpush1.msra.mxu0 0.0
  %1027 = vmatprep.subr.mxu0 0.0
  %1028 = vmatpush1.msra.mxu0 0.0
  %1029 = vmatprep.subr.mxu0 0.0
  %1030 = vmatpush1.msra.mxu0 0.0
  %1031 = vmatprep.subr.mxu0 0.0
  %1032 = vmatpush1.msra.mxu0 0.0
  %1033 = vmatprep.subr.mxu0 0.0
  %1034 = vmatpush1.msra.mxu0 0.0
  %1035 = vmatprep.subr.mxu0 0.0
  %1036 = vmatpush1.msra.mxu0 0.0
  %1037 = vmatprep.subr.mxu0 0.0
  %1038 = vmatpush1.msra.mxu0 0.0
  %1039 = vmatprep.subr.mxu0 0.0
  %1040 = vmatpush1.msra.mxu0 0.0
  %1041 = vmatprep.subr.mxu0 0.0
  %1042 = vmatpush1.msra.mxu0 0.0
  %1043 = vmatprep.subr.mxu0 0.0
  %1044 = vmatpush1.msra.mxu0 0.0
  %1045 = vmatprep.subr.mxu0 0.0
  %1046 = vmatpush1.msra.mxu0 0.0
  %1047 = vmatprep.subr.mxu0 0.0
  %1048 = vmatpush1.msra.mxu0 0.0
  %1049 = vmatprep.subr.mxu0 0.0
  %1050 = vmatpush1.msra.mxu0 0.0
  %1051 = vmatprep.subr.mxu0 0.0
  %1052 = vmatpush1.msra.mxu0 0.0
  %1053 = vmatprep.subr.mxu0 0.0
  %1054 = vmatpush1.msra.mxu0 0.0
  %1055 = vmatprep.subr.mxu0 0.0
  %1056 = vmatpush1.msra.mxu0 0.0
  %1057 = vmatprep.subr.mxu0 0.0
  %1058 = vmatpush1.msra.mxu0 0.0
  %1059 = vmatprep.subr.mxu0 0.0
  %1060 = vmatpush1.msra.mxu0 0.0
  %1061 = vmatprep.subr.mxu0 0.0
  %1062 = vmatpush1.msra.mxu0 0.0
  %1063 = vmatprep.mubr.f32.mxu0 0.0
  %1064 = vmatmul.mubr.f32.gmra.mrb[0].mxu0 %v808
  %v1065 = vpop.f32.mrb[0].mxu0
  %v1066 = vadd.f32 %v94, %v1065
  %v1067 = vpop.f32.mrb[0].mxu0
  %1068 = vmatprep.mubr.f32.mxu0 0.0
  %1069 = vmatmul.mubr.f32.gmra.mrb[0].mxu0 %v811
  %v1070 = vpop.f32.mrb[0].mxu0
  %v1071 = vadd.f32 %v94, %v1070
  %v1072 = vpop.f32.mrb[0].mxu0
  %1073 = vmatprep.mubr.f32.mxu0 0.0
  %1074 = vmatmul.mubr.f32.gmra.mrb[0].mxu0 %v814
  %v1075 = vpop.f32.mrb[0].mxu0
  %v1076 = vadd.f32 %v94, %v1075
  %v1077 = vpop.f32.mrb[0].mxu0
  %1078 = vmatprep.mubr.f32.mxu0 0.0
  %1079 = vmatmul.mubr.f32.gmra.mrb[0].mxu0 %v817
  %v1080 = vpop.f32.mrb[0].mxu0
  %v1081 = vadd.f32 %v94, %v1080
  %v1082 = vpop.f32.mrb[0].mxu0
  %1083 = vmatprep.mubr.f32.mxu0 0.0
  %1084 = vmatmul.mubr.f32.gmra.mrb[0].mxu0 %v820
  %v1085 = vpop.f32.mrb[0].mxu0
  %v1086 = vadd.f32 %v94, %v1085
  %v1087 = vpop.f32.mrb[0].mxu0
  %1088 = vmatprep.mubr.f32.mxu0 0.0
  %1089 = vmatmul.mubr.f32.gmra.mrb[0].mxu0 %v823
  %v1090 = vpop.f32.mrb[0].mxu0
  %v1091 = vadd.f32 %v94, %v1090
  %v1092 = vpop.f32.mrb[0].mxu0
  %1093 = vmatprep.mubr.f32.mxu0 0.0
  %1094 = vmatmul.mubr.f32.gmra.mrb[0].mxu0 %v826
  %v1095 = vpop.f32.mrb[0].mxu0
  %v1096 = vadd.f32 %v94, %v1095
  %v1097 = vpop.f32.mrb[0].mxu0
  %1098 = vmatprep.mubr.f32.mxu0 0.0
  %1099 = vmatmul.mubr.f32.gmra.mrb[0].mxu0 %v829
  %v1100 = vpop.f32.mrb[0].mxu0
  %v1101 = vadd.f32 %v94, %v1100
  %v1102 = vpop.f32.mrb[0].mxu0
  %1103 = vmatprep.mubr.f32.mxu0 0.0
  %1104 = vmatmul.mubr.f32.gmra.mrb[0].mxu0 %v832
  %v1105 = vpop.f32.mrb[0].mxu0
  %v1106 = vadd.f32 %v94, %v1105
  %v1107 = vpop.f32.mrb[0].mxu0
  %1108 = vmatprep.mubr.f32.mxu0 0.0
  %1109 = vmatmul.mubr.f32.gmra.mrb[0].mxu0 %v835
  %v1110 = vpop.f32.mrb[0].mxu0
  %v1111 = vadd.f32 %v94, %v1110
  %v1112 = vpop.f32.mrb[0].mxu0
  %1113 = vmatprep.mubr.f32.mxu0 0.0
  %1114 = vmatmul.mubr.f32.gmra.mrb[0].mxu0 %v838
  %v1115 = vpop.f32.mrb[0].mxu0
  %v1116 = vadd.f32 %v94, %v1115
  %v1117 = vpop.f32.mrb[0].mxu0
  %1118 = vmatprep.mubr.f32.mxu0 0.0
  %1119 = vmatmul.mubr.f32.gmra.mrb[0].mxu0 %v841
  %v1120 = vpop.f32.mrb[0].mxu0
  %v1121 = vadd.f32 %v94, %v1120
  %v1122 = vpop.f32.mrb[0].mxu0
  %1123 = vmatprep.mubr.f32.mxu0 0.0
  %1124 = vmatmul.mubr.f32.gmra.mrb[0].mxu0 %v844
  %v1125 = vpop.f32.mrb[0].mxu0
  %v1126 = vadd.f32 %v94, %v1125
  %v1127 = vpop.f32.mrb[0].mxu0
  %1128 = vmatprep.mubr.f32.mxu0 0.0
  %1129 = vmatmul.mubr.f32.gmra.mrb[0].mxu0 %v847
  %v1130 = vpop.f32.mrb[0].mxu0
  %v1131 = vadd.f32 %v94, %v1130
  %v1132 = vpop.f32.mrb[0].mxu0
  %1133 = vmatprep.mubr.f32.mxu0 0.0
  %1134 = vmatmul.mubr.f32.gmra.mrb[0].mxu0 %v850
  %v1135 = vpop.f32.mrb[0].mxu0
  %v1136 = vadd.f32 %v94, %v1135
  %v1137 = vpop.f32.mrb[0].mxu0
  %1138 = vmatprep.mubr.f32.mxu0 0.0
  %1139 = vmatmul.mubr.f32.gmra.mrb[0].mxu0 %v853
  %v1140 = vpop.f32.mrb[0].mxu0
  %v1141 = vadd.f32 %v94, %v1140
  %v1142 = vpop.f32.mrb[0].mxu0
  %1143 = vmatprep.mubr.f32.mxu0 0.0
  %1144 = vmatmul.mubr.f32.gmra.mrb[0].mxu0 %v856
  %v1145 = vpop.f32.mrb[0].mxu0
  %v1146 = vadd.f32 %v94, %v1145
  %v1147 = vpop.f32.mrb[0].mxu0
  %1148 = vmatprep.mubr.f32.mxu0 0.0
  %1149 = vmatmul.mubr.f32.gmra.mrb[0].mxu0 %v859
  %v1150 = vpop.f32.mrb[0].mxu0
  %v1151 = vadd.f32 %v94, %v1150
  %v1152 = vpop.f32.mrb[0].mxu0
  %1153 = vmatprep.mubr.f32.mxu0 0.0
  %1154 = vmatmul.mubr.f32.gmra.mrb[0].mxu0 %v862
  %v1155 = vpop.f32.mrb[0].mxu0
  %v1156 = vadd.f32 %v94, %v1155
  %v1157 = vpop.f32.mrb[0].mxu0
  %1158 = vmatprep.mubr.f32.mxu0 0.0
  %1159 = vmatmul.mubr.f32.gmra.mrb[0].mxu0 %v865
  %v1160 = vpop.f32.mrb[0].mxu0
  %v1161 = vadd.f32 %v94, %v1160
  %v1162 = vpop.f32.mrb[0].mxu0
  %1163 = vmatprep.mubr.f32.mxu0 0.0
  %1164 = vmatmul.mubr.f32.gmra.mrb[0].mxu0 %v868
  %v1165 = vpop.f32.mrb[0].mxu0
  %v1166 = vadd.f32 %v94, %v1165
  %v1167 = vpop.f32.mrb[0].mxu0
  %1168 = vmatprep.mubr.f32.mxu0 0.0
  %1169 = vmatmul.mubr.f32.gmra.mrb[0].mxu0 %v871
  %v1170 = vpop.f32.mrb[0].mxu0
  %v1171 = vadd.f32 %v94, %v1170
  %v1172 = vpop.f32.mrb[0].mxu0
  %1173 = vmatprep.mubr.f32.mxu0 0.0
  %1174 = vmatmul.mubr.f32.gmra.mrb[0].mxu0 %v874
  %v1175 = vpop.f32.mrb[0].mxu0
  %v1176 = vadd.f32 %v94, %v1175
  %v1177 = vpop.f32.mrb[0].mxu0
  %1178 = vmatprep.mubr.f32.mxu0 0.0
  %1179 = vmatmul.mubr.f32.gmra.mrb[0].mxu0 %v877
  %v1180 = vpop.f32.mrb[0].mxu0
  %v1181 = vadd.f32 %v94, %v1180
  %v1182 = vpop.f32.mrb[0].mxu0
  %1183 = vmatprep.mubr.f32.mxu0 0.0
  %1184 = vmatmul.mubr.f32.gmra.mrb[0].mxu0 %v880
  %v1185 = vpop.f32.mrb[0].mxu0
  %v1186 = vadd.f32 %v94, %v1185
  %v1187 = vpop.f32.mrb[0].mxu0
  %1188 = vmatprep.mubr.f32.mxu0 0.0
  %1189 = vmatmul.mubr.f32.gmra.mrb[0].mxu0 %v883
  %v1190 = vpop.f32.mrb[0].mxu0
  %v1191 = vadd.f32 %v94, %v1190
  %v1192 = vpop.f32.mrb[0].mxu0
  %1193 = vmatprep.mubr.f32.mxu0 0.0
  %1194 = vmatmul.mubr.f32.gmra.mrb[0].mxu0 %v886
  %v1195 = vpop.f32.mrb[0].mxu0
  %v1196 = vadd.f32 %v94, %v1195
  %v1197 = vpop.f32.mrb[0].mxu0
  %1198 = vmatprep.mubr.f32.mxu0 0.0
  %1199 = vmatmul.mubr.f32.gmra.mrb[0].mxu0 %v889
  %v1200 = vpop.f32.mrb[0].mxu0
  %v1201 = vadd.f32 %v94, %v1200
  %v1202 = vpop.f32.mrb[0].mxu0
  %1203 = vmatprep.mubr.f32.mxu0 0.0
  %1204 = vmatmul.mubr.f32.gmra.mrb[0].mxu0 %v892
  %v1205 = vpop.f32.mrb[0].mxu0
  %v1206 = vadd.f32 %v94, %v1205
  %v1207 = vpop.f32.mrb[0].mxu0
  %1208 = vmatprep.mubr.f32.mxu0 0.0
  %1209 = vmatmul.mubr.f32.gmra.mrb[0].mxu0 %v895
  %v1210 = vpop.f32.mrb[0].mxu0
  %v1211 = vadd.f32 %v94, %v1210
  %v1212 = vpop.f32.mrb[0].mxu0
  %1213 = vmatprep.mubr.f32.mxu0 0.0
  %1214 = vmatmul.mubr.f32.gmra.mrb[0].mxu0 %v898
  %v1215 = vpop.f32.mrb[0].mxu0
  %v1216 = vadd.f32 %v94, %v1215
  %v1217 = vpop.f32.mrb[0].mxu0
  %1218 = vmatprep.mubr.f32.mxu0 0.0
  %1219 = vmatmul.mubr.f32.gmra.mrb[0].mxu0 %v901
  %v1220 = vpop.f32.mrb[0].mxu0
  %v1221 = vadd.f32 %v94, %v1220
  %v1222 = vpop.f32.mrb[0].mxu0
  %1223 = vmatprep.mubr.f32.mxu0 0.0
  %1224 = vmatmul.mubr.f32.gmra.mrb[0].mxu0 %v904
  %v1225 = vpop.f32.mrb[0].mxu0
  %v1226 = vadd.f32 %v94, %v1225
  %v1227 = vpop.f32.mrb[0].mxu0
  %1228 = vmatprep.mubr.f32.mxu0 0.0
  %1229 = vmatmul.mubr.f32.gmra.mrb[0].mxu0 %v907
  %v1230 = vpop.f32.mrb[0].mxu0
  %v1231 = vadd.f32 %v94, %v1230
  %v1232 = vpop.f32.mrb[0].mxu0
  %1233 = vmatprep.mubr.f32.mxu0 0.0
  %1234 = vmatmul.mubr.f32.gmra.mrb[0].mxu0 %v910
  %v1235 = vpop.f32.mrb[0].mxu0
  %v1236 = vadd.f32 %v94, %v1235
  %v1237 = vpop.f32.mrb[0].mxu0
  %1238 = vmatprep.mubr.f32.mxu0 0.0
  %1239 = vmatmul.mubr.f32.gmra.mrb[0].mxu0 %v913
  %v1240 = vpop.f32.mrb[0].mxu0
  %v1241 = vadd.f32 %v94, %v1240
  %v1242 = vpop.f32.mrb[0].mxu0
  %1243 = vmatprep.mubr.f32.mxu0 0.0
  %1244 = vmatmul.mubr.f32.gmra.mrb[0].mxu0 %v916
  %v1245 = vpop.f32.mrb[0].mxu0
  %v1246 = vadd.f32 %v94, %v1245
  %v1247 = vpop.f32.mrb[0].mxu0
  %1248 = vmatprep.mubr.f32.mxu0 0.0
  %1249 = vmatmul.mubr.f32.gmra.mrb[0].mxu0 %v919
  %v1250 = vpop.f32.mrb[0].mxu0
  %v1251 = vadd.f32 %v94, %v1250
  %v1252 = vpop.f32.mrb[0].mxu0
  %1253 = vmatprep.mubr.f32.mxu0 0.0
  %1254 = vmatmul.mubr.f32.gmra.mrb[0].mxu0 %v922
  %v1255 = vpop.f32.mrb[0].mxu0
  %v1256 = vadd.f32 %v94, %v1255
  %v1257 = vpop.f32.mrb[0].mxu0
  %1258 = vmatprep.mubr.f32.mxu0 0.0
  %1259 = vmatmul.mubr.f32.gmra.mrb[0].mxu0 %v925
  %v1260 = vpop.f32.mrb[0].mxu0
  %v1261 = vadd.f32 %v94, %v1260
  %v1262 = vpop.f32.mrb[0].mxu0
  %1263 = vmatprep.mubr.f32.mxu0 0.0
  %1264 = vmatmul.mubr.f32.gmra.mrb[0].mxu0 %v928
  %v1265 = vpop.f32.mrb[0].mxu0
  %v1266 = vadd.f32 %v94, %v1265
  %v1267 = vpop.f32.mrb[0].mxu0
  %1268 = vmatprep.mubr.f32.mxu0 0.0
  %1269 = vmatmul.mubr.f32.gmra.mrb[0].mxu0 %v931
  %v1270 = vpop.f32.mrb[0].mxu0
  %v1271 = vadd.f32 %v94, %v1270
  %v1272 = vpop.f32.mrb[0].mxu0
  %1273 = vmatprep.mubr.f32.mxu0 0.0
  %1274 = vmatmul.mubr.f32.gmra.mrb[0].mxu0 %v934
  %v1275 = vpop.f32.mrb[0].mxu0
  %v1276 = vadd.f32 %v94, %v1275
  %v1277 = vpop.f32.mrb[0].mxu0
  %1278 = vmatprep.mubr.f32.mxu0 0.0
  %1279 = vmatmul.mubr.f32.gmra.mrb[0].mxu0 %v937
  %v1280 = vpop.f32.mrb[0].mxu0
  %v1281 = vadd.f32 %v94, %v1280
  %v1282 = vpop.f32.mrb[0].mxu0
  %1283 = vmatprep.mubr.f32.mxu0 0.0
  %1284 = vmatmul.mubr.f32.gmra.mrb[0].mxu0 %v940
  %v1285 = vpop.f32.mrb[0].mxu0
  %v1286 = vadd.f32 %v94, %v1285
  %v1287 = vpop.f32.mrb[0].mxu0
  %1288 = vmatprep.mubr.f32.mxu0 0.0
  %1289 = vmatmul.mubr.f32.gmra.mrb[0].mxu0 %v943
  %v1290 = vpop.f32.mrb[0].mxu0
  %v1291 = vadd.f32 %v94, %v1290
  %v1292 = vpop.f32.mrb[0].mxu0
  %1293 = vmatprep.mubr.f32.mxu0 0.0
  %1294 = vmatmul.mubr.f32.gmra.mrb[0].mxu0 %v946
  %v1295 = vpop.f32.mrb[0].mxu0
  %v1296 = vadd.f32 %v94, %v1295
  %v1297 = vpop.f32.mrb[0].mxu0
  %1298 = vmatprep.mubr.f32.mxu0 0.0
  %1299 = vmatmul.mubr.f32.gmra.mrb[0].mxu0 %v949
  %v1300 = vpop.f32.mrb[0].mxu0
  %v1301 = vadd.f32 %v94, %v1300
  %v1302 = vpop.f32.mrb[0].mxu0
  %1303 = vmatprep.mubr.f32.mxu0 0.0
  %1304 = vmatmul.mubr.f32.gmra.mrb[0].mxu0 %v952
  %v1305 = vpop.f32.mrb[0].mxu0
  %v1306 = vadd.f32 %v94, %v1305
  %v1307 = vpop.f32.mrb[0].mxu0
  %1308 = vmatprep.mubr.f32.mxu0 0.0
  %1309 = vmatmul.mubr.f32.gmra.mrb[0].mxu0 %v955
  %v1310 = vpop.f32.mrb[0].mxu0
  %v1311 = vadd.f32 %v94, %v1310
  %v1312 = vpop.f32.mrb[0].mxu0
  %1313 = vmatprep.mubr.f32.mxu0 0.0
  %1314 = vmatmul.mubr.f32.gmra.mrb[0].mxu0 %v958
  %v1315 = vpop.f32.mrb[0].mxu0
  %v1316 = vadd.f32 %v94, %v1315
  %v1317 = vpop.f32.mrb[0].mxu0
  %1318 = vmatprep.mubr.f32.mxu0 0.0
  %1319 = vmatmul.mubr.f32.gmra.mrb[0].mxu0 %v961
  %v1320 = vpop.f32.mrb[0].mxu0
  %v1321 = vadd.f32 %v94, %v1320
  %v1322 = vpop.f32.mrb[0].mxu0
  %1323 = vmatprep.mubr.f32.mxu0 0.0
  %1324 = vmatmul.mubr.f32.gmra.mrb[0].mxu0 %v964
  %v1325 = vpop.f32.mrb[0].mxu0
  %v1326 = vadd.f32 %v94, %v1325
  %v1327 = vpop.f32.mrb[0].mxu0
  %1328 = vmatprep.mubr.f32.mxu0 0.0
  %1329 = vmatmul.mubr.f32.gmra.mrb[0].mxu0 %v967
  %v1330 = vpop.f32.mrb[0].mxu0
  %v1331 = vadd.f32 %v94, %v1330
  %v1332 = vpop.f32.mrb[0].mxu0
  %1333 = vmatprep.mubr.f32.mxu0 0.0
  %1334 = vmatmul.mubr.f32.gmra.mrb[0].mxu0 %v970
  %v1335 = vpop.f32.mrb[0].mxu0
  %v1336 = vadd.f32 %v94, %v1335
  %v1337 = vpop.f32.mrb[0].mxu0
  %1338 = vmatprep.mubr.f32.mxu0 0.0
  %1339 = vmatmul.mubr.f32.gmra.mrb[0].mxu0 %v973
  %v1340 = vpop.f32.mrb[0].mxu0
  %v1341 = vadd.f32 %v94, %v1340
  %v1342 = vpop.f32.mrb[0].mxu0
  %1343 = vmatprep.mubr.f32.mxu0 0.0
  %1344 = vmatmul.mubr.f32.gmra.mrb[0].mxu0 %v976
  %v1345 = vpop.f32.mrb[0].mxu0
  %v1346 = vadd.f32 %v94, %v1345
  %v1347 = vpop.f32.mrb[0].mxu0
  %1348 = vmatprep.mubr.f32.mxu0 0.0
  %1349 = vmatmul.mubr.f32.gmra.mrb[0].mxu0 %v979
  %v1350 = vpop.f32.mrb[0].mxu0
  %v1351 = vadd.f32 %v94, %v1350
  %v1352 = vpop.f32.mrb[0].mxu0
  %1353 = vmatprep.mubr.f32.mxu0 0.0
  %1354 = vmatmul.mubr.f32.gmra.mrb[0].mxu0 %v982
  %v1355 = vpop.f32.mrb[0].mxu0
  %v1356 = vadd.f32 %v94, %v1355
  %v1357 = vpop.f32.mrb[0].mxu0
  %1358 = vmatprep.mubr.f32.mxu0 0.0
  %1359 = vmatmul.mubr.f32.gmra.mrb[0].mxu0 %v985
  %v1360 = vpop.f32.mrb[0].mxu0
  %v1361 = vadd.f32 %v94, %v1360
  %v1362 = vpop.f32.mrb[0].mxu0
  %1363 = vmatprep.mubr.f32.mxu0 0.0
  %1364 = vmatmul.mubr.f32.gmra.mrb[0].mxu0 %v988
  %v1365 = vpop.f32.mrb[0].mxu0
  %v1366 = vadd.f32 %v94, %v1365
  %v1367 = vpop.f32.mrb[0].mxu0
  %1368 = vmatprep.mubr.f32.mxu0 0.0
  %1369 = vmatmul.mubr.f32.gmra.mrb[0].mxu0 %v991
  %v1370 = vpop.f32.mrb[0].mxu0
  %v1371 = vadd.f32 %v94, %v1370
  %v1372 = vpop.f32.mrb[0].mxu0
  %1373 = vmatprep.mubr.f32.mxu0 0.0
  %1374 = vmatmul.mubr.f32.gmra.mrb[0].mxu0 %v994
  %v1375 = vpop.f32.mrb[0].mxu0
  %v1376 = vadd.f32 %v94, %v1375
  %v1377 = vpop.f32.mrb[0].mxu0
  %1378 = vmatprep.mubr.f32.mxu0 0.0
  %1379 = vmatmul.mubr.f32.gmra.mrb[0].mxu0 %v997
  %v1380 = vpop.f32.mrb[0].mxu0
  %v1381 = vadd.f32 %v94, %v1380
  %v1382 = vpop.f32.mrb[0].mxu0
  %1383 = vdwg.mxu0
  %v1384 = vmax.f32 %v1066, 0.0
  %v1385 = vmax.f32 %v1071, 0.0
  %v1386 = vmax.f32 %v1076, 0.0
  %v1387 = vmax.f32 %v1081, 0.0
  %v1388 = vmax.f32 %v1086, 0.0
  %v1389 = vmax.f32 %v1091, 0.0
  %v1390 = vmax.f32 %v1096, 0.0
  %v1391 = vmax.f32 %v1101, 0.0
  %v1392 = vmax.f32 %v1106, 0.0
  %v1393 = vmax.f32 %v1111, 0.0
  %v1394 = vmax.f32 %v1116, 0.0
  %v1395 = vmax.f32 %v1121, 0.0
  %v1396 = vmax.f32 %v1126, 0.0
  %v1397 = vmax.f32 %v1131, 0.0
  %v1398 = vmax.f32 %v1136, 0.0
  %v1399 = vmax.f32 %v1141, 0.0
  %v1400 = vmax.f32 %v1146, 0.0
  %v1401 = vmax.f32 %v1151, 0.0
  %v1402 = vmax.f32 %v1156, 0.0
  %v1403 = vmax.f32 %v1161, 0.0
  %v1404 = vmax.f32 %v1166, 0.0
  %v1405 = vmax.f32 %v1171, 0.0
  %v1406 = vmax.f32 %v1176, 0.0
  %v1407 = vmax.f32 %v1181, 0.0
  %v1408 = vmax.f32 %v1186, 0.0
  %v1409 = vmax.f32 %v1191, 0.0
  %v1410 = vmax.f32 %v1196, 0.0
  %v1411 = vmax.f32 %v1201, 0.0
  %v1412 = vmax.f32 %v1206, 0.0
  %v1413 = vmax.f32 %v1211, 0.0
  %v1414 = vmax.f32 %v1216, 0.0
  %v1415 = vmax.f32 %v1221, 0.0
  %v1416 = vmax.f32 %v1226, 0.0
  %v1417 = vmax.f32 %v1231, 0.0
  %v1418 = vmax.f32 %v1236, 0.0
  %v1419 = vmax.f32 %v1241, 0.0
  %v1420 = vmax.f32 %v1246, 0.0
  %v1421 = vmax.f32 %v1251, 0.0
  %v1422 = vmax.f32 %v1256, 0.0
  %v1423 = vmax.f32 %v1261, 0.0
  %v1424 = vmax.f32 %v1266, 0.0
  %v1425 = vmax.f32 %v1271, 0.0
  %v1426 = vmax.f32 %v1276, 0.0
  %v1427 = vmax.f32 %v1281, 0.0
  %v1428 = vmax.f32 %v1286, 0.0
  %v1429 = vmax.f32 %v1291, 0.0
  %v1430 = vmax.f32 %v1296, 0.0
  %v1431 = vmax.f32 %v1301, 0.0
  %v1432 = vmax.f32 %v1306, 0.0
  %v1433 = vmax.f32 %v1311, 0.0
  %v1434 = vmax.f32 %v1316, 0.0
  %v1435 = vmax.f32 %v1321, 0.0
  %v1436 = vmax.f32 %v1326, 0.0
  %v1437 = vmax.f32 %v1331, 0.0
  %v1438 = vmax.f32 %v1336, 0.0
  %v1439 = vmax.f32 %v1341, 0.0
  %v1440 = vmax.f32 %v1346, 0.0
  %v1441 = vmax.f32 %v1351, 0.0
  %v1442 = vmax.f32 %v1356, 0.0
  %v1443 = vmax.f32 %v1361, 0.0
  %v1444 = vmax.f32 %v1366, 0.0
  %v1445 = vmax.f32 %v1371, 0.0
  %v1446 = vmax.f32 %v1376, 0.0
  %v1447 = vmax.f32 %v1381, 0.0
  %v1448 = vmax.f32 %v678, %v1384
  %v1449 = vmax.f32 %v679, %v1385
  %v1450 = vmax.f32 %v680, %v1386
  %v1451 = vmax.f32 %v681, %v1387
  %v1452 = vmax.f32 %v682, %v1388
  %v1453 = vmax.f32 %v683, %v1389
  %v1454 = vmax.f32 %v684, %v1390
  %v1455 = vmax.f32 %v685, %v1391
  %v1456 = vmax.f32 %v686, %v1392
  %v1457 = vmax.f32 %v687, %v1393
  %v1458 = vmax.f32 %v688, %v1394
  %v1459 = vmax.f32 %v689, %v1395
  %v1460 = vmax.f32 %v690, %v1396
  %v1461 = vmax.f32 %v691, %v1397
  %v1462 = vmax.f32 %v692, %v1398
  %v1463 = vmax.f32 %v693, %v1399
  %v1464 = vmax.f32 %v694, %v1400
  %v1465 = vmax.f32 %v695, %v1401
  %v1466 = vmax.f32 %v696, %v1402
  %v1467 = vmax.f32 %v697, %v1403
  %v1468 = vmax.f32 %v698, %v1404
  %v1469 = vmax.f32 %v699, %v1405
  %v1470 = vmax.f32 %v700, %v1406
  %v1471 = vmax.f32 %v701, %v1407
  %v1472 = vmax.f32 %v702, %v1408
  %v1473 = vmax.f32 %v703, %v1409
  %v1474 = vmax.f32 %v704, %v1410
  %v1475 = vmax.f32 %v705, %v1411
  %v1476 = vmax.f32 %v706, %v1412
  %v1477 = vmax.f32 %v707, %v1413
  %v1478 = vmax.f32 %v708, %v1414
  %v1479 = vmax.f32 %v709, %v1415
  %v1480 = vmax.f32 %v710, %v1416
  %v1481 = vmax.f32 %v711, %v1417
  %v1482 = vmax.f32 %v712, %v1418
  %v1483 = vmax.f32 %v713, %v1419
  %v1484 = vmax.f32 %v714, %v1420
  %v1485 = vmax.f32 %v715, %v1421
  %v1486 = vmax.f32 %v716, %v1422
  %v1487 = vmax.f32 %v717, %v1423
  %v1488 = vmax.f32 %v718, %v1424
  %v1489 = vmax.f32 %v719, %v1425
  %v1490 = vmax.f32 %v720, %v1426
  %v1491 = vmax.f32 %v721, %v1427
  %v1492 = vmax.f32 %v722, %v1428
  %v1493 = vmax.f32 %v723, %v1429
  %v1494 = vmax.f32 %v724, %v1430
  %v1495 = vmax.f32 %v725, %v1431
  %v1496 = vmax.f32 %v726, %v1432
  %v1497 = vmax.f32 %v727, %v1433
  %v1498 = vmax.f32 %v728, %v1434
  %v1499 = vmax.f32 %v729, %v1435
  %v1500 = vmax.f32 %v730, %v1436
  %v1501 = vmax.f32 %v731, %v1437
  %v1502 = vmax.f32 %v732, %v1438
  %v1503 = vmax.f32 %v733, %v1439
  %v1504 = vmax.f32 %v734, %v1440
  %v1505 = vmax.f32 %v735, %v1441
  %v1506 = vmax.f32 %v736, %v1442
  %v1507 = vmax.f32 %v737, %v1443
  %v1508 = vmax.f32 %v738, %v1444
  %v1509 = vmax.f32 %v739, %v1445
  %v1510 = vmax.f32 %v740, %v1446
  %v1511 = vmax.f32 %v741, %v1447
  %s1512 = scalar_lea.vmem %s0, 1024
  %v1513 = vld [vmem:[%s1512] sm:$0xff]
  %v1514 = vld [vmem:[%s1512 + $0x8] sm:$0xff]
  %v1515 = vld [vmem:[%s1512 + $0x10] sm:$0xff]
  %v1516 = vld [vmem:[%s1512 + $0x18] sm:$0xff]
  %v1517 = vld [vmem:[%s1512 + $0x20] sm:$0xff]
  %v1518 = vld [vmem:[%s1512 + $0x28] sm:$0xff]
  %v1519 = vld [vmem:[%s1512 + $0x30] sm:$0xff]
  %v1520 = vld [vmem:[%s1512 + $0x38] sm:$0xff]
  %v1521 = vld [vmem:[%s1512 + $0x40] sm:$0xff]
  %v1522 = vld [vmem:[%s1512 + $0x48] sm:$0xff]
  %v1523 = vld [vmem:[%s1512 + $0x50] sm:$0xff]
  %v1524 = vld [vmem:[%s1512 + $0x58] sm:$0xff]
  %v1525 = vld [vmem:[%s1512 + $0x60] sm:$0xff]
  %v1526 = vld [vmem:[%s1512 + $0x68] sm:$0xff]
  %v1527 = vld [vmem:[%s1512 + $0x70] sm:$0xff]
  %v1528 = vld [vmem:[%s1512 + $0x78] sm:$0xff]
  %v1529 = vld [vmem:[%s1512 + $0x80] sm:$0xff]
  %v1530 = vld [vmem:[%s1512 + $0x88] sm:$0xff]
  %v1531 = vld [vmem:[%s1512 + $0x90] sm:$0xff]
  %v1532 = vld [vmem:[%s1512 + $0x98] sm:$0xff]
  %v1533 = vld [vmem:[%s1512 + $0xa0] sm:$0xff]
  %v1534 = vld [vmem:[%s1512 + $0xa8] sm:$0xff]
  %v1535 = vld [vmem:[%s1512 + $0xb0] sm:$0xff]
  %v1536 = vld [vmem:[%s1512 + $0xb8] sm:$0xff]
  %v1537 = vld [vmem:[%s1512 + $0xc0] sm:$0xff]
  %v1538 = vld [vmem:[%s1512 + $0xc8] sm:$0xff]
  %v1539 = vld [vmem:[%s1512 + $0xd0] sm:$0xff]
  %v1540 = vld [vmem:[%s1512 + $0xd8] sm:$0xff]
  %v1541 = vld [vmem:[%s1512 + $0xe0] sm:$0xff]
  %v1542 = vld [vmem:[%s1512 + $0xe8] sm:$0xff]
  %v1543 = vld [vmem:[%s1512 + $0xf0] sm:$0xff]
  %v1544 = vld [vmem:[%s1512 + $0xf8] sm:$0xff]
  %v1545 = vld [vmem:[%s1512 + $0x100] sm:$0xff]
  %v1546 = vld [vmem:[%s1512 + $0x108] sm:$0xff]
  %v1547 = vld [vmem:[%s1512 + $0x110] sm:$0xff]
  %v1548 = vld [vmem:[%s1512 + $0x118] sm:$0xff]
  %v1549 = vld [vmem:[%s1512 + $0x120] sm:$0xff]
  %v1550 = vld [vmem:[%s1512 + $0x128] sm:$0xff]
  %v1551 = vld [vmem:[%s1512 + $0x130] sm:$0xff]
  %v1552 = vld [vmem:[%s1512 + $0x138] sm:$0xff]
  %v1553 = vld [vmem:[%s1512 + $0x140] sm:$0xff]
  %v1554 = vld [vmem:[%s1512 + $0x148] sm:$0xff]
  %v1555 = vld [vmem:[%s1512 + $0x150] sm:$0xff]
  %v1556 = vld [vmem:[%s1512 + $0x158] sm:$0xff]
  %v1557 = vld [vmem:[%s1512 + $0x160] sm:$0xff]
  %v1558 = vld [vmem:[%s1512 + $0x168] sm:$0xff]
  %v1559 = vld [vmem:[%s1512 + $0x170] sm:$0xff]
  %v1560 = vld [vmem:[%s1512 + $0x178] sm:$0xff]
  %v1561 = vld [vmem:[%s1512 + $0x180] sm:$0xff]
  %v1562 = vld [vmem:[%s1512 + $0x188] sm:$0xff]
  %v1563 = vld [vmem:[%s1512 + $0x190] sm:$0xff]
  %v1564 = vld [vmem:[%s1512 + $0x198] sm:$0xff]
  %v1565 = vld [vmem:[%s1512 + $0x1a0] sm:$0xff]
  %v1566 = vld [vmem:[%s1512 + $0x1a8] sm:$0xff]
  %v1567 = vld [vmem:[%s1512 + $0x1b0] sm:$0xff]
  %v1568 = vld [vmem:[%s1512 + $0x1b8] sm:$0xff]
  %v1569 = vld [vmem:[%s1512 + $0x1c0] sm:$0xff]
  %v1570 = vld [vmem:[%s1512 + $0x1c8] sm:$0xff]
  %v1571 = vld [vmem:[%s1512 + $0x1d0] sm:$0xff]
  %v1572 = vld [vmem:[%s1512 + $0x1d8] sm:$0xff]
  %v1573 = vld [vmem:[%s1512 + $0x1e0] sm:$0xff]
  %v1574 = vld [vmem:[%s1512 + $0x1e8] sm:$0xff]
  %v1575 = vld [vmem:[%s1512 + $0x1f0] sm:$0xff]
  %v1576 = vld [vmem:[%s1512 + $0x1f8] sm:$0xff]
  %v1578 = vsel %vm96, %v1513, 0
  %v1581 = vsel %vm96, %v1514, 0
  %v1584 = vsel %vm96, %v1515, 0
  %v1587 = vsel %vm96, %v1516, 0
  %v1590 = vsel %vm96, %v1517, 0
  %v1593 = vsel %vm96, %v1518, 0
  %v1596 = vsel %vm96, %v1519, 0
  %v1599 = vsel %vm96, %v1520, 0
  %v1602 = vsel %vm96, %v1521, 0
  %v1605 = vsel %vm96, %v1522, 0
  %v1608 = vsel %vm96, %v1523, 0
  %v1611 = vsel %vm96, %v1524, 0
  %v1614 = vsel %vm96, %v1525, 0
  %v1617 = vsel %vm96, %v1526, 0
  %v1620 = vsel %vm96, %v1527, 0
  %v1623 = vsel %vm96, %v1528, 0
  %v1626 = vsel %vm96, %v1529, 0
  %v1629 = vsel %vm96, %v1530, 0
  %v1632 = vsel %vm96, %v1531, 0
  %v1635 = vsel %vm96, %v1532, 0
  %v1638 = vsel %vm96, %v1533, 0
  %v1641 = vsel %vm96, %v1534, 0
  %v1644 = vsel %vm96, %v1535, 0
  %v1647 = vsel %vm96, %v1536, 0
  %v1650 = vsel %vm96, %v1537, 0
  %v1653 = vsel %vm96, %v1538, 0
  %v1656 = vsel %vm96, %v1539, 0
  %v1659 = vsel %vm96, %v1540, 0
  %v1662 = vsel %vm96, %v1541, 0
  %v1665 = vsel %vm96, %v1542, 0
  %v1668 = vsel %vm96, %v1543, 0
  %v1671 = vsel %vm96, %v1544, 0
  %v1674 = vsel %vm96, %v1545, 0
  %v1677 = vsel %vm96, %v1546, 0
  %v1680 = vsel %vm96, %v1547, 0
  %v1683 = vsel %vm96, %v1548, 0
  %v1686 = vsel %vm96, %v1549, 0
  %v1689 = vsel %vm96, %v1550, 0
  %v1692 = vsel %vm96, %v1551, 0
  %v1695 = vsel %vm96, %v1552, 0
  %v1698 = vsel %vm96, %v1553, 0
  %v1701 = vsel %vm96, %v1554, 0
  %v1704 = vsel %vm96, %v1555, 0
  %v1707 = vsel %vm96, %v1556, 0
  %v1710 = vsel %vm96, %v1557, 0
  %v1713 = vsel %vm96, %v1558, 0
  %v1716 = vsel %vm96, %v1559, 0
  %v1719 = vsel %vm96, %v1560, 0
  %v1722 = vsel %vm96, %v1561, 0
  %v1725 = vsel %vm96, %v1562, 0
  %v1728 = vsel %vm96, %v1563, 0
  %v1731 = vsel %vm96, %v1564, 0
  %v1734 = vsel %vm96, %v1565, 0
  %v1737 = vsel %vm96, %v1566, 0
  %v1740 = vsel %vm96, %v1567, 0
  %v1743 = vsel %vm96, %v1568, 0
  %v1746 = vsel %vm96, %v1569, 0
  %v1749 = vsel %vm96, %v1570, 0
  %v1752 = vsel %vm96, %v1571, 0
  %v1755 = vsel %vm96, %v1572, 0
  %v1758 = vsel %vm96, %v1573, 0
  %v1761 = vsel %vm96, %v1574, 0
  %v1764 = vsel %vm96, %v1575, 0
  %v1767 = vsel %vm96, %v1576, 0
  %1769 = vmatprep.subr.mxu0 0.0
  %1770 = vmatpush1.msra.mxu0 %v23
  %1771 = vmatprep.subr.mxu0 0.0
  %1772 = vmatpush1.msra.mxu0 %v291
  %1773 = vmatprep.subr.mxu0 0.0
  %1774 = vmatpush1.msra.mxu0 0.0
  %1775 = vmatprep.subr.mxu0 0.0
  %1776 = vmatpush1.msra.mxu0 0.0
  %1777 = vmatprep.subr.mxu0 0.0
  %1778 = vmatpush1.msra.mxu0 0.0
  %1779 = vmatprep.subr.mxu0 0.0
  %1780 = vmatpush1.msra.mxu0 0.0
  %1781 = vmatprep.subr.mxu0 0.0
  %1782 = vmatpush1.msra.mxu0 0.0
  %1783 = vmatprep.subr.mxu0 0.0
  %1784 = vmatpush1.msra.mxu0 0.0
  %1785 = vmatprep.subr.mxu0 0.0
  %1786 = vmatpush1.msra.mxu0 0.0
  %1787 = vmatprep.subr.mxu0 0.0
  %1788 = vmatpush1.msra.mxu0 0.0
  %1789 = vmatprep.subr.mxu0 0.0
  %1790 = vmatpush1.msra.mxu0 0.0
  %1791 = vmatprep.subr.mxu0 0.0
  %1792 = vmatpush1.msra.mxu0 0.0
  %1793 = vmatprep.subr.mxu0 0.0
  %1794 = vmatpush1.msra.mxu0 0.0
  %1795 = vmatprep.subr.mxu0 0.0
  %1796 = vmatpush1.msra.mxu0 0.0
  %1797 = vmatprep.subr.mxu0 0.0
  %1798 = vmatpush1.msra.mxu0 0.0
  %1799 = vmatprep.subr.mxu0 0.0
  %1800 = vmatpush1.msra.mxu0 0.0
  %1801 = vmatprep.subr.mxu0 0.0
  %1802 = vmatpush1.msra.mxu0 0.0
  %1803 = vmatprep.subr.mxu0 0.0
  %1804 = vmatpush1.msra.mxu0 0.0
  %1805 = vmatprep.subr.mxu0 0.0
  %1806 = vmatpush1.msra.mxu0 0.0
  %1807 = vmatprep.subr.mxu0 0.0
  %1808 = vmatpush1.msra.mxu0 0.0
  %1809 = vmatprep.subr.mxu0 0.0
  %1810 = vmatpush1.msra.mxu0 0.0
  %1811 = vmatprep.subr.mxu0 0.0
  %1812 = vmatpush1.msra.mxu0 0.0
  %1813 = vmatprep.subr.mxu0 0.0
  %1814 = vmatpush1.msra.mxu0 0.0
  %1815 = vmatprep.subr.mxu0 0.0
  %1816 = vmatpush1.msra.mxu0 0.0
  %1817 = vmatprep.subr.mxu0 0.0
  %1818 = vmatpush1.msra.mxu0 0.0
  %1819 = vmatprep.subr.mxu0 0.0
  %1820 = vmatpush1.msra.mxu0 0.0
  %1821 = vmatprep.subr.mxu0 0.0
  %1822 = vmatpush1.msra.mxu0 0.0
  %1823 = vmatprep.subr.mxu0 0.0
  %1824 = vmatpush1.msra.mxu0 0.0
  %1825 = vmatprep.subr.mxu0 0.0
  %1826 = vmatpush1.msra.mxu0 0.0
  %1827 = vmatprep.subr.mxu0 0.0
  %1828 = vmatpush1.msra.mxu0 0.0
  %1829 = vmatprep.subr.mxu0 0.0
  %1830 = vmatpush1.msra.mxu0 0.0
  %1831 = vmatprep.subr.mxu0 0.0
  %1832 = vmatpush1.msra.mxu0 0.0
  %1833 = vmatprep.mubr.f32.mxu0 0.0
  %1834 = vmatmul.mubr.f32.gmra.mrb[0].mxu0 %v1578
  %v1835 = vpop.f32.mrb[0].mxu0
  %v1836 = vadd.f32 %v94, %v1835
  %v1837 = vpop.f32.mrb[0].mxu0
  %1838 = vmatprep.mubr.f32.mxu0 0.0
  %1839 = vmatmul.mubr.f32.gmra.mrb[0].mxu0 %v1581
  %v1840 = vpop.f32.mrb[0].mxu0
  %v1841 = vadd.f32 %v94, %v1840
  %v1842 = vpop.f32.mrb[0].mxu0
  %1843 = vmatprep.mubr.f32.mxu0 0.0
  %1844 = vmatmul.mubr.f32.gmra.mrb[0].mxu0 %v1584
  %v1845 = vpop.f32.mrb[0].mxu0
  %v1846 = vadd.f32 %v94, %v1845
  %v1847 = vpop.f32.mrb[0].mxu0
  %1848 = vmatprep.mubr.f32.mxu0 0.0
  %1849 = vmatmul.mubr.f32.gmra.mrb[0].mxu0 %v1587
  %v1850 = vpop.f32.mrb[0].mxu0
  %v1851 = vadd.f32 %v94, %v1850
  %v1852 = vpop.f32.mrb[0].mxu0
  %1853 = vmatprep.mubr.f32.mxu0 0.0
  %1854 = vmatmul.mubr.f32.gmra.mrb[0].mxu0 %v1590
  %v1855 = vpop.f32.mrb[0].mxu0
  %v1856 = vadd.f32 %v94, %v1855
  %v1857 = vpop.f32.mrb[0].mxu0
  %1858 = vmatprep.mubr.f32.mxu0 0.0
  %1859 = vmatmul.mubr.f32.gmra.mrb[0].mxu0 %v1593
  %v1860 = vpop.f32.mrb[0].mxu0
  %v1861 = vadd.f32 %v94, %v1860
  %v1862 = vpop.f32.mrb[0].mxu0
  %1863 = vmatprep.mubr.f32.mxu0 0.0
  %1864 = vmatmul.mubr.f32.gmra.mrb[0].mxu0 %v1596
  %v1865 = vpop.f32.mrb[0].mxu0
  %v1866 = vadd.f32 %v94, %v1865
  %v1867 = vpop.f32.mrb[0].mxu0
  %1868 = vmatprep.mubr.f32.mxu0 0.0
  %1869 = vmatmul.mubr.f32.gmra.mrb[0].mxu0 %v1599
  %v1870 = vpop.f32.mrb[0].mxu0
  %v1871 = vadd.f32 %v94, %v1870
  %v1872 = vpop.f32.mrb[0].mxu0
  %1873 = vmatprep.mubr.f32.mxu0 0.0
  %1874 = vmatmul.mubr.f32.gmra.mrb[0].mxu0 %v1602
  %v1875 = vpop.f32.mrb[0].mxu0
  %v1876 = vadd.f32 %v94, %v1875
  %v1877 = vpop.f32.mrb[0].mxu0
  %1878 = vmatprep.mubr.f32.mxu0 0.0
  %1879 = vmatmul.mubr.f32.gmra.mrb[0].mxu0 %v1605
  %v1880 = vpop.f32.mrb[0].mxu0
  %v1881 = vadd.f32 %v94, %v1880
  %v1882 = vpop.f32.mrb[0].mxu0
  %1883 = vmatprep.mubr.f32.mxu0 0.0
  %1884 = vmatmul.mubr.f32.gmra.mrb[0].mxu0 %v1608
  %v1885 = vpop.f32.mrb[0].mxu0
  %v1886 = vadd.f32 %v94, %v1885
  %v1887 = vpop.f32.mrb[0].mxu0
  %1888 = vmatprep.mubr.f32.mxu0 0.0
  %1889 = vmatmul.mubr.f32.gmra.mrb[0].mxu0 %v1611
  %v1890 = vpop.f32.mrb[0].mxu0
  %v1891 = vadd.f32 %v94, %v1890
  %v1892 = vpop.f32.mrb[0].mxu0
  %1893 = vmatprep.mubr.f32.mxu0 0.0
  %1894 = vmatmul.mubr.f32.gmra.mrb[0].mxu0 %v1614
  %v1895 = vpop.f32.mrb[0].mxu0
  %v1896 = vadd.f32 %v94, %v1895
  %v1897 = vpop.f32.mrb[0].mxu0
  %1898 = vmatprep.mubr.f32.mxu0 0.0
  %1899 = vmatmul.mubr.f32.gmra.mrb[0].mxu0 %v1617
  %v1900 = vpop.f32.mrb[0].mxu0
  %v1901 = vadd.f32 %v94, %v1900
  %v1902 = vpop.f32.mrb[0].mxu0
  %1903 = vmatprep.mubr.f32.mxu0 0.0
  %1904 = vmatmul.mubr.f32.gmra.mrb[0].mxu0 %v1620
  %v1905 = vpop.f32.mrb[0].mxu0
  %v1906 = vadd.f32 %v94, %v1905
  %v1907 = vpop.f32.mrb[0].mxu0
  %1908 = vmatprep.mubr.f32.mxu0 0.0
  %1909 = vmatmul.mubr.f32.gmra.mrb[0].mxu0 %v1623
  %v1910 = vpop.f32.mrb[0].mxu0
  %v1911 = vadd.f32 %v94, %v1910
  %v1912 = vpop.f32.mrb[0].mxu0
  %1913 = vmatprep.mubr.f32.mxu0 0.0
  %1914 = vmatmul.mubr.f32.gmra.mrb[0].mxu0 %v1626
  %v1915 = vpop.f32.mrb[0].mxu0
  %v1916 = vadd.f32 %v94, %v1915
  %v1917 = vpop.f32.mrb[0].mxu0
  %1918 = vmatprep.mubr.f32.mxu0 0.0
  %1919 = vmatmul.mubr.f32.gmra.mrb[0].mxu0 %v1629
  %v1920 = vpop.f32.mrb[0].mxu0
  %v1921 = vadd.f32 %v94, %v1920
  %v1922 = vpop.f32.mrb[0].mxu0
  %1923 = vmatprep.mubr.f32.mxu0 0.0
  %1924 = vmatmul.mubr.f32.gmra.mrb[0].mxu0 %v1632
  %v1925 = vpop.f32.mrb[0].mxu0
  %v1926 = vadd.f32 %v94, %v1925
  %v1927 = vpop.f32.mrb[0].mxu0
  %1928 = vmatprep.mubr.f32.mxu0 0.0
  %1929 = vmatmul.mubr.f32.gmra.mrb[0].mxu0 %v1635
  %v1930 = vpop.f32.mrb[0].mxu0
  %v1931 = vadd.f32 %v94, %v1930
  %v1932 = vpop.f32.mrb[0].mxu0
  %1933 = vmatprep.mubr.f32.mxu0 0.0
  %1934 = vmatmul.mubr.f32.gmra.mrb[0].mxu0 %v1638
  %v1935 = vpop.f32.mrb[0].mxu0
  %v1936 = vadd.f32 %v94, %v1935
  %v1937 = vpop.f32.mrb[0].mxu0
  %1938 = vmatprep.mubr.f32.mxu0 0.0
  %1939 = vmatmul.mubr.f32.gmra.mrb[0].mxu0 %v1641
  %v1940 = vpop.f32.mrb[0].mxu0
  %v1941 = vadd.f32 %v94, %v1940
  %v1942 = vpop.f32.mrb[0].mxu0
  %1943 = vmatprep.mubr.f32.mxu0 0.0
  %1944 = vmatmul.mubr.f32.gmra.mrb[0].mxu0 %v1644
  %v1945 = vpop.f32.mrb[0].mxu0
  %v1946 = vadd.f32 %v94, %v1945
  %v1947 = vpop.f32.mrb[0].mxu0
  %1948 = vmatprep.mubr.f32.mxu0 0.0
  %1949 = vmatmul.mubr.f32.gmra.mrb[0].mxu0 %v1647
  %v1950 = vpop.f32.mrb[0].mxu0
  %v1951 = vadd.f32 %v94, %v1950
  %v1952 = vpop.f32.mrb[0].mxu0
  %1953 = vmatprep.mubr.f32.mxu0 0.0
  %1954 = vmatmul.mubr.f32.gmra.mrb[0].mxu0 %v1650
  %v1955 = vpop.f32.mrb[0].mxu0
  %v1956 = vadd.f32 %v94, %v1955
  %v1957 = vpop.f32.mrb[0].mxu0
  %1958 = vmatprep.mubr.f32.mxu0 0.0
  %1959 = vmatmul.mubr.f32.gmra.mrb[0].mxu0 %v1653
  %v1960 = vpop.f32.mrb[0].mxu0
  %v1961 = vadd.f32 %v94, %v1960
  %v1962 = vpop.f32.mrb[0].mxu0
  %1963 = vmatprep.mubr.f32.mxu0 0.0
  %1964 = vmatmul.mubr.f32.gmra.mrb[0].mxu0 %v1656
  %v1965 = vpop.f32.mrb[0].mxu0
  %v1966 = vadd.f32 %v94, %v1965
  %v1967 = vpop.f32.mrb[0].mxu0
  %1968 = vmatprep.mubr.f32.mxu0 0.0
  %1969 = vmatmul.mubr.f32.gmra.mrb[0].mxu0 %v1659
  %v1970 = vpop.f32.mrb[0].mxu0
  %v1971 = vadd.f32 %v94, %v1970
  %v1972 = vpop.f32.mrb[0].mxu0
  %1973 = vmatprep.mubr.f32.mxu0 0.0
  %1974 = vmatmul.mubr.f32.gmra.mrb[0].mxu0 %v1662
  %v1975 = vpop.f32.mrb[0].mxu0
  %v1976 = vadd.f32 %v94, %v1975
  %v1977 = vpop.f32.mrb[0].mxu0
  %1978 = vmatprep.mubr.f32.mxu0 0.0
  %1979 = vmatmul.mubr.f32.gmra.mrb[0].mxu0 %v1665
  %v1980 = vpop.f32.mrb[0].mxu0
  %v1981 = vadd.f32 %v94, %v1980
  %v1982 = vpop.f32.mrb[0].mxu0
  %1983 = vmatprep.mubr.f32.mxu0 0.0
  %1984 = vmatmul.mubr.f32.gmra.mrb[0].mxu0 %v1668
  %v1985 = vpop.f32.mrb[0].mxu0
  %v1986 = vadd.f32 %v94, %v1985
  %v1987 = vpop.f32.mrb[0].mxu0
  %1988 = vmatprep.mubr.f32.mxu0 0.0
  %1989 = vmatmul.mubr.f32.gmra.mrb[0].mxu0 %v1671
  %v1990 = vpop.f32.mrb[0].mxu0
  %v1991 = vadd.f32 %v94, %v1990
  %v1992 = vpop.f32.mrb[0].mxu0
  %1993 = vmatprep.mubr.f32.mxu0 0.0
  %1994 = vmatmul.mubr.f32.gmra.mrb[0].mxu0 %v1674
  %v1995 = vpop.f32.mrb[0].mxu0
  %v1996 = vadd.f32 %v94, %v1995
  %v1997 = vpop.f32.mrb[0].mxu0
  %1998 = vmatprep.mubr.f32.mxu0 0.0
  %1999 = vmatmul.mubr.f32.gmra.mrb[0].mxu0 %v1677
  %v2000 = vpop.f32.mrb[0].mxu0
  %v2001 = vadd.f32 %v94, %v2000
  %v2002 = vpop.f32.mrb[0].mxu0
  %2003 = vmatprep.mubr.f32.mxu0 0.0
  %2004 = vmatmul.mubr.f32.gmra.mrb[0].mxu0 %v1680
  %v2005 = vpop.f32.mrb[0].mxu0
  %v2006 = vadd.f32 %v94, %v2005
  %v2007 = vpop.f32.mrb[0].mxu0
  %2008 = vmatprep.mubr.f32.mxu0 0.0
  %2009 = vmatmul.mubr.f32.gmra.mrb[0].mxu0 %v1683
  %v2010 = vpop.f32.mrb[0].mxu0
  %v2011 = vadd.f32 %v94, %v2010
  %v2012 = vpop.f32.mrb[0].mxu0
  %2013 = vmatprep.mubr.f32.mxu0 0.0
  %2014 = vmatmul.mubr.f32.gmra.mrb[0].mxu0 %v1686
  %v2015 = vpop.f32.mrb[0].mxu0
  %v2016 = vadd.f32 %v94, %v2015
  %v2017 = vpop.f32.mrb[0].mxu0
  %2018 = vmatprep.mubr.f32.mxu0 0.0
  %2019 = vmatmul.mubr.f32.gmra.mrb[0].mxu0 %v1689
  %v2020 = vpop.f32.mrb[0].mxu0
  %v2021 = vadd.f32 %v94, %v2020
  %v2022 = vpop.f32.mrb[0].mxu0
  %2023 = vmatprep.mubr.f32.mxu0 0.0
  %2024 = vmatmul.mubr.f32.gmra.mrb[0].mxu0 %v1692
  %v2025 = vpop.f32.mrb[0].mxu0
  %v2026 = vadd.f32 %v94, %v2025
  %v2027 = vpop.f32.mrb[0].mxu0
  %2028 = vmatprep.mubr.f32.mxu0 0.0
  %2029 = vmatmul.mubr.f32.gmra.mrb[0].mxu0 %v1695
  %v2030 = vpop.f32.mrb[0].mxu0
  %v2031 = vadd.f32 %v94, %v2030
  %v2032 = vpop.f32.mrb[0].mxu0
  %2033 = vmatprep.mubr.f32.mxu0 0.0
  %2034 = vmatmul.mubr.f32.gmra.mrb[0].mxu0 %v1698
  %v2035 = vpop.f32.mrb[0].mxu0
  %v2036 = vadd.f32 %v94, %v2035
  %v2037 = vpop.f32.mrb[0].mxu0
  %2038 = vmatprep.mubr.f32.mxu0 0.0
  %2039 = vmatmul.mubr.f32.gmra.mrb[0].mxu0 %v1701
  %v2040 = vpop.f32.mrb[0].mxu0
  %v2041 = vadd.f32 %v94, %v2040
  %v2042 = vpop.f32.mrb[0].mxu0
  %2043 = vmatprep.mubr.f32.mxu0 0.0
  %2044 = vmatmul.mubr.f32.gmra.mrb[0].mxu0 %v1704
  %v2045 = vpop.f32.mrb[0].mxu0
  %v2046 = vadd.f32 %v94, %v2045
  %v2047 = vpop.f32.mrb[0].mxu0
  %2048 = vmatprep.mubr.f32.mxu0 0.0
  %2049 = vmatmul.mubr.f32.gmra.mrb[0].mxu0 %v1707
  %v2050 = vpop.f32.mrb[0].mxu0
  %v2051 = vadd.f32 %v94, %v2050
  %v2052 = vpop.f32.mrb[0].mxu0
  %2053 = vmatprep.mubr.f32.mxu0 0.0
  %2054 = vmatmul.mubr.f32.gmra.mrb[0].mxu0 %v1710
  %v2055 = vpop.f32.mrb[0].mxu0
  %v2056 = vadd.f32 %v94, %v2055
  %v2057 = vpop.f32.mrb[0].mxu0
  %2058 = vmatprep.mubr.f32.mxu0 0.0
  %2059 = vmatmul.mubr.f32.gmra.mrb[0].mxu0 %v1713
  %v2060 = vpop.f32.mrb[0].mxu0
  %v2061 = vadd.f32 %v94, %v2060
  %v2062 = vpop.f32.mrb[0].mxu0
  %2063 = vmatprep.mubr.f32.mxu0 0.0
  %2064 = vmatmul.mubr.f32.gmra.mrb[0].mxu0 %v1716
  %v2065 = vpop.f32.mrb[0].mxu0
  %v2066 = vadd.f32 %v94, %v2065
  %v2067 = vpop.f32.mrb[0].mxu0
  %2068 = vmatprep.mubr.f32.mxu0 0.0
  %2069 = vmatmul.mubr.f32.gmra.mrb[0].mxu0 %v1719
  %v2070 = vpop.f32.mrb[0].mxu0
  %v2071 = vadd.f32 %v94, %v2070
  %v2072 = vpop.f32.mrb[0].mxu0
  %2073 = vmatprep.mubr.f32.mxu0 0.0
  %2074 = vmatmul.mubr.f32.gmra.mrb[0].mxu0 %v1722
  %v2075 = vpop.f32.mrb[0].mxu0
  %v2076 = vadd.f32 %v94, %v2075
  %v2077 = vpop.f32.mrb[0].mxu0
  %2078 = vmatprep.mubr.f32.mxu0 0.0
  %2079 = vmatmul.mubr.f32.gmra.mrb[0].mxu0 %v1725
  %v2080 = vpop.f32.mrb[0].mxu0
  %v2081 = vadd.f32 %v94, %v2080
  %v2082 = vpop.f32.mrb[0].mxu0
  %2083 = vmatprep.mubr.f32.mxu0 0.0
  %2084 = vmatmul.mubr.f32.gmra.mrb[0].mxu0 %v1728
  %v2085 = vpop.f32.mrb[0].mxu0
  %v2086 = vadd.f32 %v94, %v2085
  %v2087 = vpop.f32.mrb[0].mxu0
  %2088 = vmatprep.mubr.f32.mxu0 0.0
  %2089 = vmatmul.mubr.f32.gmra.mrb[0].mxu0 %v1731
  %v2090 = vpop.f32.mrb[0].mxu0
  %v2091 = vadd.f32 %v94, %v2090
  %v2092 = vpop.f32.mrb[0].mxu0
  %2093 = vmatprep.mubr.f32.mxu0 0.0
  %2094 = vmatmul.mubr.f32.gmra.mrb[0].mxu0 %v1734
  %v2095 = vpop.f32.mrb[0].mxu0
  %v2096 = vadd.f32 %v94, %v2095
  %v2097 = vpop.f32.mrb[0].mxu0
  %2098 = vmatprep.mubr.f32.mxu0 0.0
  %2099 = vmatmul.mubr.f32.gmra.mrb[0].mxu0 %v1737
  %v2100 = vpop.f32.mrb[0].mxu0
  %v2101 = vadd.f32 %v94, %v2100
  %v2102 = vpop.f32.mrb[0].mxu0
  %2103 = vmatprep.mubr.f32.mxu0 0.0
  %2104 = vmatmul.mubr.f32.gmra.mrb[0].mxu0 %v1740
  %v2105 = vpop.f32.mrb[0].mxu0
  %v2106 = vadd.f32 %v94, %v2105
  %v2107 = vpop.f32.mrb[0].mxu0
  %2108 = vmatprep.mubr.f32.mxu0 0.0
  %2109 = vmatmul.mubr.f32.gmra.mrb[0].mxu0 %v1743
  %v2110 = vpop.f32.mrb[0].mxu0
  %v2111 = vadd.f32 %v94, %v2110
  %v2112 = vpop.f32.mrb[0].mxu0
  %2113 = vmatprep.mubr.f32.mxu0 0.0
  %2114 = vmatmul.mubr.f32.gmra.mrb[0].mxu0 %v1746
  %v2115 = vpop.f32.mrb[0].mxu0
  %v2116 = vadd.f32 %v94, %v2115
  %v2117 = vpop.f32.mrb[0].mxu0
  %2118 = vmatprep.mubr.f32.mxu0 0.0
  %2119 = vmatmul.mubr.f32.gmra.mrb[0].mxu0 %v1749
  %v2120 = vpop.f32.mrb[0].mxu0
  %v2121 = vadd.f32 %v94, %v2120
  %v2122 = vpop.f32.mrb[0].mxu0
  %2123 = vmatprep.mubr.f32.mxu0 0.0
  %2124 = vmatmul.mubr.f32.gmra.mrb[0].mxu0 %v1752
  %v2125 = vpop.f32.mrb[0].mxu0
  %v2126 = vadd.f32 %v94, %v2125
  %v2127 = vpop.f32.mrb[0].mxu0
  %2128 = vmatprep.mubr.f32.mxu0 0.0
  %2129 = vmatmul.mubr.f32.gmra.mrb[0].mxu0 %v1755
  %v2130 = vpop.f32.mrb[0].mxu0
  %v2131 = vadd.f32 %v94, %v2130
  %v2132 = vpop.f32.mrb[0].mxu0
  %2133 = vmatprep.mubr.f32.mxu0 0.0
  %2134 = vmatmul.mubr.f32.gmra.mrb[0].mxu0 %v1758
  %v2135 = vpop.f32.mrb[0].mxu0
  %v2136 = vadd.f32 %v94, %v2135
  %v2137 = vpop.f32.mrb[0].mxu0
  %2138 = vmatprep.mubr.f32.mxu0 0.0
  %2139 = vmatmul.mubr.f32.gmra.mrb[0].mxu0 %v1761
  %v2140 = vpop.f32.mrb[0].mxu0
  %v2141 = vadd.f32 %v94, %v2140
  %v2142 = vpop.f32.mrb[0].mxu0
  %2143 = vmatprep.mubr.f32.mxu0 0.0
  %2144 = vmatmul.mubr.f32.gmra.mrb[0].mxu0 %v1764
  %v2145 = vpop.f32.mrb[0].mxu0
  %v2146 = vadd.f32 %v94, %v2145
  %v2147 = vpop.f32.mrb[0].mxu0
  %2148 = vmatprep.mubr.f32.mxu0 0.0
  %2149 = vmatmul.mubr.f32.gmra.mrb[0].mxu0 %v1767
  %v2150 = vpop.f32.mrb[0].mxu0
  %v2151 = vadd.f32 %v94, %v2150
  %v2152 = vpop.f32.mrb[0].mxu0
  %2153 = vdwg.mxu0
  %v2154 = vmax.f32 %v1836, 0.0
  %v2155 = vmax.f32 %v1841, 0.0
  %v2156 = vmax.f32 %v1846, 0.0
  %v2157 = vmax.f32 %v1851, 0.0
  %v2158 = vmax.f32 %v1856, 0.0
  %v2159 = vmax.f32 %v1861, 0.0
  %v2160 = vmax.f32 %v1866, 0.0
  %v2161 = vmax.f32 %v1871, 0.0
  %v2162 = vmax.f32 %v1876, 0.0
  %v2163 = vmax.f32 %v1881, 0.0
  %v2164 = vmax.f32 %v1886, 0.0
  %v2165 = vmax.f32 %v1891, 0.0
  %v2166 = vmax.f32 %v1896, 0.0
  %v2167 = vmax.f32 %v1901, 0.0
  %v2168 = vmax.f32 %v1906, 0.0
  %v2169 = vmax.f32 %v1911, 0.0
  %v2170 = vmax.f32 %v1916, 0.0
  %v2171 = vmax.f32 %v1921, 0.0
  %v2172 = vmax.f32 %v1926, 0.0
  %v2173 = vmax.f32 %v1931, 0.0
  %v2174 = vmax.f32 %v1936, 0.0
  %v2175 = vmax.f32 %v1941, 0.0
  %v2176 = vmax.f32 %v1946, 0.0
  %v2177 = vmax.f32 %v1951, 0.0
  %v2178 = vmax.f32 %v1956, 0.0
  %v2179 = vmax.f32 %v1961, 0.0
  %v2180 = vmax.f32 %v1966, 0.0
  %v2181 = vmax.f32 %v1971, 0.0
  %v2182 = vmax.f32 %v1976, 0.0
  %v2183 = vmax.f32 %v1981, 0.0
  %v2184 = vmax.f32 %v1986, 0.0
  %v2185 = vmax.f32 %v1991, 0.0
  %v2186 = vmax.f32 %v1996, 0.0
  %v2187 = vmax.f32 %v2001, 0.0
  %v2188 = vmax.f32 %v2006, 0.0
  %v2189 = vmax.f32 %v2011, 0.0
  %v2190 = vmax.f32 %v2016, 0.0
  %v2191 = vmax.f32 %v2021, 0.0
  %v2192 = vmax.f32 %v2026, 0.0
  %v2193 = vmax.f32 %v2031, 0.0
  %v2194 = vmax.f32 %v2036, 0.0
  %v2195 = vmax.f32 %v2041, 0.0
  %v2196 = vmax.f32 %v2046, 0.0
  %v2197 = vmax.f32 %v2051, 0.0
  %v2198 = vmax.f32 %v2056, 0.0
  %v2199 = vmax.f32 %v2061, 0.0
  %v2200 = vmax.f32 %v2066, 0.0
  %v2201 = vmax.f32 %v2071, 0.0
  %v2202 = vmax.f32 %v2076, 0.0
  %v2203 = vmax.f32 %v2081, 0.0
  %v2204 = vmax.f32 %v2086, 0.0
  %v2205 = vmax.f32 %v2091, 0.0
  %v2206 = vmax.f32 %v2096, 0.0
  %v2207 = vmax.f32 %v2101, 0.0
  %v2208 = vmax.f32 %v2106, 0.0
  %v2209 = vmax.f32 %v2111, 0.0
  %v2210 = vmax.f32 %v2116, 0.0
  %v2211 = vmax.f32 %v2121, 0.0
  %v2212 = vmax.f32 %v2126, 0.0
  %v2213 = vmax.f32 %v2131, 0.0
  %v2214 = vmax.f32 %v2136, 0.0
  %v2215 = vmax.f32 %v2141, 0.0
  %v2216 = vmax.f32 %v2146, 0.0
  %v2217 = vmax.f32 %v2151, 0.0
  %v2218 = vmax.f32 %v1448, %v2154
  %v2219 = vmax.f32 %v1449, %v2155
  %v2220 = vmax.f32 %v1450, %v2156
  %v2221 = vmax.f32 %v1451, %v2157
  %v2222 = vmax.f32 %v1452, %v2158
  %v2223 = vmax.f32 %v1453, %v2159
  %v2224 = vmax.f32 %v1454, %v2160
  %v2225 = vmax.f32 %v1455, %v2161
  %v2226 = vmax.f32 %v1456, %v2162
  %v2227 = vmax.f32 %v1457, %v2163
  %v2228 = vmax.f32 %v1458, %v2164
  %v2229 = vmax.f32 %v1459, %v2165
  %v2230 = vmax.f32 %v1460, %v2166
  %v2231 = vmax.f32 %v1461, %v2167
  %v2232 = vmax.f32 %v1462, %v2168
  %v2233 = vmax.f32 %v1463, %v2169
  %v2234 = vmax.f32 %v1464, %v2170
  %v2235 = vmax.f32 %v1465, %v2171
  %v2236 = vmax.f32 %v1466, %v2172
  %v2237 = vmax.f32 %v1467, %v2173
  %v2238 = vmax.f32 %v1468, %v2174
  %v2239 = vmax.f32 %v1469, %v2175
  %v2240 = vmax.f32 %v1470, %v2176
  %v2241 = vmax.f32 %v1471, %v2177
  %v2242 = vmax.f32 %v1472, %v2178
  %v2243 = vmax.f32 %v1473, %v2179
  %v2244 = vmax.f32 %v1474, %v2180
  %v2245 = vmax.f32 %v1475, %v2181
  %v2246 = vmax.f32 %v1476, %v2182
  %v2247 = vmax.f32 %v1477, %v2183
  %v2248 = vmax.f32 %v1478, %v2184
  %v2249 = vmax.f32 %v1479, %v2185
  %v2250 = vmax.f32 %v1480, %v2186
  %v2251 = vmax.f32 %v1481, %v2187
  %v2252 = vmax.f32 %v1482, %v2188
  %v2253 = vmax.f32 %v1483, %v2189
  %v2254 = vmax.f32 %v1484, %v2190
  %v2255 = vmax.f32 %v1485, %v2191
  %v2256 = vmax.f32 %v1486, %v2192
  %v2257 = vmax.f32 %v1487, %v2193
  %v2258 = vmax.f32 %v1488, %v2194
  %v2259 = vmax.f32 %v1489, %v2195
  %v2260 = vmax.f32 %v1490, %v2196
  %v2261 = vmax.f32 %v1491, %v2197
  %v2262 = vmax.f32 %v1492, %v2198
  %v2263 = vmax.f32 %v1493, %v2199
  %v2264 = vmax.f32 %v1494, %v2200
  %v2265 = vmax.f32 %v1495, %v2201
  %v2266 = vmax.f32 %v1496, %v2202
  %v2267 = vmax.f32 %v1497, %v2203
  %v2268 = vmax.f32 %v1498, %v2204
  %v2269 = vmax.f32 %v1499, %v2205
  %v2270 = vmax.f32 %v1500, %v2206
  %v2271 = vmax.f32 %v1501, %v2207
  %v2272 = vmax.f32 %v1502, %v2208
  %v2273 = vmax.f32 %v1503, %v2209
  %v2274 = vmax.f32 %v1504, %v2210
  %v2275 = vmax.f32 %v1505, %v2211
  %v2276 = vmax.f32 %v1506, %v2212
  %v2277 = vmax.f32 %v1507, %v2213
  %v2278 = vmax.f32 %v1508, %v2214
  %v2279 = vmax.f32 %v1509, %v2215
  %v2280 = vmax.f32 %v1510, %v2216
  %v2281 = vmax.f32 %v1511, %v2217
  %s2282 = scalar_lea.vmem %s0, 1536
  %v2283 = vld [vmem:[%s2282] sm:$0xff]
  %v2284 = vld [vmem:[%s2282 + $0x8] sm:$0xff]
  %v2285 = vld [vmem:[%s2282 + $0x10] sm:$0xff]
  %v2286 = vld [vmem:[%s2282 + $0x18] sm:$0xff]
  %v2287 = vld [vmem:[%s2282 + $0x20] sm:$0xff]
  %v2288 = vld [vmem:[%s2282 + $0x28] sm:$0xff]
  %v2289 = vld [vmem:[%s2282 + $0x30] sm:$0xff]
  %v2290 = vld [vmem:[%s2282 + $0x38] sm:$0xff]
  %v2291 = vld [vmem:[%s2282 + $0x40] sm:$0xff]
  %v2292 = vld [vmem:[%s2282 + $0x48] sm:$0xff]
  %v2293 = vld [vmem:[%s2282 + $0x50] sm:$0xff]
  %v2294 = vld [vmem:[%s2282 + $0x58] sm:$0xff]
  %v2295 = vld [vmem:[%s2282 + $0x60] sm:$0xff]
  %v2296 = vld [vmem:[%s2282 + $0x68] sm:$0xff]
  %v2297 = vld [vmem:[%s2282 + $0x70] sm:$0xff]
  %v2298 = vld [vmem:[%s2282 + $0x78] sm:$0xff]
  %v2299 = vld [vmem:[%s2282 + $0x80] sm:$0xff]
  %v2300 = vld [vmem:[%s2282 + $0x88] sm:$0xff]
  %v2301 = vld [vmem:[%s2282 + $0x90] sm:$0xff]
  %v2302 = vld [vmem:[%s2282 + $0x98] sm:$0xff]
  %v2303 = vld [vmem:[%s2282 + $0xa0] sm:$0xff]
  %v2304 = vld [vmem:[%s2282 + $0xa8] sm:$0xff]
  %v2305 = vld [vmem:[%s2282 + $0xb0] sm:$0xff]
  %v2306 = vld [vmem:[%s2282 + $0xb8] sm:$0xff]
  %v2307 = vld [vmem:[%s2282 + $0xc0] sm:$0xff]
  %v2308 = vld [vmem:[%s2282 + $0xc8] sm:$0xff]
  %v2309 = vld [vmem:[%s2282 + $0xd0] sm:$0xff]
  %v2310 = vld [vmem:[%s2282 + $0xd8] sm:$0xff]
  %v2311 = vld [vmem:[%s2282 + $0xe0] sm:$0xff]
  %v2312 = vld [vmem:[%s2282 + $0xe8] sm:$0xff]
  %v2313 = vld [vmem:[%s2282 + $0xf0] sm:$0xff]
  %v2314 = vld [vmem:[%s2282 + $0xf8] sm:$0xff]
  %v2315 = vld [vmem:[%s2282 + $0x100] sm:$0xff]
  %v2316 = vld [vmem:[%s2282 + $0x108] sm:$0xff]
  %v2317 = vld [vmem:[%s2282 + $0x110] sm:$0xff]
  %v2318 = vld [vmem:[%s2282 + $0x118] sm:$0xff]
  %v2319 = vld [vmem:[%s2282 + $0x120] sm:$0xff]
  %v2320 = vld [vmem:[%s2282 + $0x128] sm:$0xff]
  %v2321 = vld [vmem:[%s2282 + $0x130] sm:$0xff]
  %v2322 = vld [vmem:[%s2282 + $0x138] sm:$0xff]
  %v2323 = vld [vmem:[%s2282 + $0x140] sm:$0xff]
  %v2324 = vld [vmem:[%s2282 + $0x148] sm:$0xff]
  %v2325 = vld [vmem:[%s2282 + $0x150] sm:$0xff]
  %v2326 = vld [vmem:[%s2282 + $0x158] sm:$0xff]
  %v2327 = vld [vmem:[%s2282 + $0x160] sm:$0xff]
  %v2328 = vld [vmem:[%s2282 + $0x168] sm:$0xff]
  %v2329 = vld [vmem:[%s2282 + $0x170] sm:$0xff]
  %v2330 = vld [vmem:[%s2282 + $0x178] sm:$0xff]
  %v2331 = vld [vmem:[%s2282 + $0x180] sm:$0xff]
  %v2332 = vld [vmem:[%s2282 + $0x188] sm:$0xff]
  %v2333 = vld [vmem:[%s2282 + $0x190] sm:$0xff]
  %v2334 = vld [vmem:[%s2282 + $0x198] sm:$0xff]
  %v2335 = vld [vmem:[%s2282 + $0x1a0] sm:$0xff]
  %v2336 = vld [vmem:[%s2282 + $0x1a8] sm:$0xff]
  %v2337 = vld [vmem:[%s2282 + $0x1b0] sm:$0xff]
  %v2338 = vld [vmem:[%s2282 + $0x1b8] sm:$0xff]
  %v2339 = vld [vmem:[%s2282 + $0x1c0] sm:$0xff]
  %v2340 = vld [vmem:[%s2282 + $0x1c8] sm:$0xff]
  %v2341 = vld [vmem:[%s2282 + $0x1d0] sm:$0xff]
  %v2342 = vld [vmem:[%s2282 + $0x1d8] sm:$0xff]
  %v2343 = vld [vmem:[%s2282 + $0x1e0] sm:$0xff]
  %v2344 = vld [vmem:[%s2282 + $0x1e8] sm:$0xff]
  %v2345 = vld [vmem:[%s2282 + $0x1f0] sm:$0xff]
  %v2346 = vld [vmem:[%s2282 + $0x1f8] sm:$0xff]
  %v2348 = vsel %vm96, %v2283, 0
  %v2351 = vsel %vm96, %v2284, 0
  %v2354 = vsel %vm96, %v2285, 0
  %v2357 = vsel %vm96, %v2286, 0
  %v2360 = vsel %vm96, %v2287, 0
  %v2363 = vsel %vm96, %v2288, 0
  %v2366 = vsel %vm96, %v2289, 0
  %v2369 = vsel %vm96, %v2290, 0
  %v2372 = vsel %vm96, %v2291, 0
  %v2375 = vsel %vm96, %v2292, 0
  %v2378 = vsel %vm96, %v2293, 0
  %v2381 = vsel %vm96, %v2294, 0
  %v2384 = vsel %vm96, %v2295, 0
  %v2387 = vsel %vm96, %v2296, 0
  %v2390 = vsel %vm96, %v2297, 0
  %v2393 = vsel %vm96, %v2298, 0
  %v2396 = vsel %vm96, %v2299, 0
  %v2399 = vsel %vm96, %v2300, 0
  %v2402 = vsel %vm96, %v2301, 0
  %v2405 = vsel %vm96, %v2302, 0
  %v2408 = vsel %vm96, %v2303, 0
  %v2411 = vsel %vm96, %v2304, 0
  %v2414 = vsel %vm96, %v2305, 0
  %v2417 = vsel %vm96, %v2306, 0
  %v2420 = vsel %vm96, %v2307, 0
  %v2423 = vsel %vm96, %v2308, 0
  %v2426 = vsel %vm96, %v2309, 0
  %v2429 = vsel %vm96, %v2310, 0
  %v2432 = vsel %vm96, %v2311, 0
  %v2435 = vsel %vm96, %v2312, 0
  %v2438 = vsel %vm96, %v2313, 0
  %v2441 = vsel %vm96, %v2314, 0
  %v2444 = vsel %vm96, %v2315, 0
  %v2447 = vsel %vm96, %v2316, 0
  %v2450 = vsel %vm96, %v2317, 0
  %v2453 = vsel %vm96, %v2318, 0
  %v2456 = vsel %vm96, %v2319, 0
  %v2459 = vsel %vm96, %v2320, 0
  %v2462 = vsel %vm96, %v2321, 0
  %v2465 = vsel %vm96, %v2322, 0
  %v2468 = vsel %vm96, %v2323, 0
  %v2471 = vsel %vm96, %v2324, 0
  %v2474 = vsel %vm96, %v2325, 0
  %v2477 = vsel %vm96, %v2326, 0
  %v2480 = vsel %vm96, %v2327, 0
  %v2483 = vsel %vm96, %v2328, 0
  %v2486 = vsel %vm96, %v2329, 0
  %v2489 = vsel %vm96, %v2330, 0
  %v2492 = vsel %vm96, %v2331, 0
  %v2495 = vsel %vm96, %v2332, 0
  %v2498 = vsel %vm96, %v2333, 0
  %v2501 = vsel %vm96, %v2334, 0
  %v2504 = vsel %vm96, %v2335, 0
  %v2507 = vsel %vm96, %v2336, 0
  %v2510 = vsel %vm96, %v2337, 0
  %v2513 = vsel %vm96, %v2338, 0
  %v2516 = vsel %vm96, %v2339, 0
  %v2519 = vsel %vm96, %v2340, 0
  %v2522 = vsel %vm96, %v2341, 0
  %v2525 = vsel %vm96, %v2342, 0
  %v2528 = vsel %vm96, %v2343, 0
  %v2531 = vsel %vm96, %v2344, 0
  %v2534 = vsel %vm96, %v2345, 0
  %v2537 = vsel %vm96, %v2346, 0
  %2539 = vmatprep.subr.mxu0 0.0
  %2540 = vmatpush1.msra.mxu0 %v23
  %2541 = vmatprep.subr.mxu0 0.0
  %2542 = vmatpush1.msra.mxu0 %v291
  %2543 = vmatprep.subr.mxu0 0.0
  %2544 = vmatpush1.msra.mxu0 0.0
  %2545 = vmatprep.subr.mxu0 0.0
  %2546 = vmatpush1.msra.mxu0 0.0
  %2547 = vmatprep.subr.mxu0 0.0
  %2548 = vmatpush1.msra.mxu0 0.0
  %2549 = vmatprep.subr.mxu0 0.0
  %2550 = vmatpush1.msra.mxu0 0.0
  %2551 = vmatprep.subr.mxu0 0.0
  %2552 = vmatpush1.msra.mxu0 0.0
  %2553 = vmatprep.subr.mxu0 0.0
  %2554 = vmatpush1.msra.mxu0 0.0
  %2555 = vmatprep.subr.mxu0 0.0
  %2556 = vmatpush1.msra.mxu0 0.0
  %2557 = vmatprep.subr.mxu0 0.0
  %2558 = vmatpush1.msra.mxu0 0.0
  %2559 = vmatprep.subr.mxu0 0.0
  %2560 = vmatpush1.msra.mxu0 0.0
  %2561 = vmatprep.subr.mxu0 0.0
  %2562 = vmatpush1.msra.mxu0 0.0
  %2563 = vmatprep.subr.mxu0 0.0
  %2564 = vmatpush1.msra.mxu0 0.0
  %2565 = vmatprep.subr.mxu0 0.0
  %2566 = vmatpush1.msra.mxu0 0.0
  %2567 = vmatprep.subr.mxu0 0.0
  %2568 = vmatpush1.msra.mxu0 0.0
  %2569 = vmatprep.subr.mxu0 0.0
  %2570 = vmatpush1.msra.mxu0 0.0
  %2571 = vmatprep.subr.mxu0 0.0
  %2572 = vmatpush1.msra.mxu0 0.0
  %2573 = vmatprep.subr.mxu0 0.0
  %2574 = vmatpush1.msra.mxu0 0.0
  %2575 = vmatprep.subr.mxu0 0.0
  %2576 = vmatpush1.msra.mxu0 0.0
  %2577 = vmatprep.subr.mxu0 0.0
  %2578 = vmatpush1.msra.mxu0 0.0
  %2579 = vmatprep.subr.mxu0 0.0
  %2580 = vmatpush1.msra.mxu0 0.0
  %2581 = vmatprep.subr.mxu0 0.0
  %2582 = vmatpush1.msra.mxu0 0.0
  %2583 = vmatprep.subr.mxu0 0.0
  %2584 = vmatpush1.msra.mxu0 0.0
  %2585 = vmatprep.subr.mxu0 0.0
  %2586 = vmatpush1.msra.mxu0 0.0
  %2587 = vmatprep.subr.mxu0 0.0
  %2588 = vmatpush1.msra.mxu0 0.0
  %2589 = vmatprep.subr.mxu0 0.0
  %2590 = vmatpush1.msra.mxu0 0.0
  %2591 = vmatprep.subr.mxu0 0.0
  %2592 = vmatpush1.msra.mxu0 0.0
  %2593 = vmatprep.subr.mxu0 0.0
  %2594 = vmatpush1.msra.mxu0 0.0
  %2595 = vmatprep.subr.mxu0 0.0
  %2596 = vmatpush1.msra.mxu0 0.0
  %2597 = vmatprep.subr.mxu0 0.0
  %2598 = vmatpush1.msra.mxu0 0.0
  %2599 = vmatprep.subr.mxu0 0.0
  %2600 = vmatpush1.msra.mxu0 0.0
  %2601 = vmatprep.subr.mxu0 0.0
  %2602 = vmatpush1.msra.mxu0 0.0
  %2603 = vmatprep.mubr.f32.mxu0 0.0
  %2604 = vmatmul.mubr.f32.gmra.mrb[0].mxu0 %v2348
  %v2605 = vpop.f32.mrb[0].mxu0
  %v2606 = vadd.f32 %v94, %v2605
  %v2607 = vpop.f32.mrb[0].mxu0
  %2608 = vmatprep.mubr.f32.mxu0 0.0
  %2609 = vmatmul.mubr.f32.gmra.mrb[0].mxu0 %v2351
  %v2610 = vpop.f32.mrb[0].mxu0
  %v2611 = vadd.f32 %v94, %v2610
  %v2612 = vpop.f32.mrb[0].mxu0
  %2613 = vmatprep.mubr.f32.mxu0 0.0
  %2614 = vmatmul.mubr.f32.gmra.mrb[0].mxu0 %v2354
  %v2615 = vpop.f32.mrb[0].mxu0
  %v2616 = vadd.f32 %v94, %v2615
  %v2617 = vpop.f32.mrb[0].mxu0
  %2618 = vmatprep.mubr.f32.mxu0 0.0
  %2619 = vmatmul.mubr.f32.gmra.mrb[0].mxu0 %v2357
  %v2620 = vpop.f32.mrb[0].mxu0
  %v2621 = vadd.f32 %v94, %v2620
  %v2622 = vpop.f32.mrb[0].mxu0
  %2623 = vmatprep.mubr.f32.mxu0 0.0
  %2624 = vmatmul.mubr.f32.gmra.mrb[0].mxu0 %v2360
  %v2625 = vpop.f32.mrb[0].mxu0
  %v2626 = vadd.f32 %v94, %v2625
  %v2627 = vpop.f32.mrb[0].mxu0
  %2628 = vmatprep.mubr.f32.mxu0 0.0
  %2629 = vmatmul.mubr.f32.gmra.mrb[0].mxu0 %v2363
  %v2630 = vpop.f32.mrb[0].mxu0
  %v2631 = vadd.f32 %v94, %v2630
  %v2632 = vpop.f32.mrb[0].mxu0
  %2633 = vmatprep.mubr.f32.mxu0 0.0
  %2634 = vmatmul.mubr.f32.gmra.mrb[0].mxu0 %v2366
  %v2635 = vpop.f32.mrb[0].mxu0
  %v2636 = vadd.f32 %v94, %v2635
  %v2637 = vpop.f32.mrb[0].mxu0
  %2638 = vmatprep.mubr.f32.mxu0 0.0
  %2639 = vmatmul.mubr.f32.gmra.mrb[0].mxu0 %v2369
  %v2640 = vpop.f32.mrb[0].mxu0
  %v2641 = vadd.f32 %v94, %v2640
  %v2642 = vpop.f32.mrb[0].mxu0
  %2643 = vmatprep.mubr.f32.mxu0 0.0
  %2644 = vmatmul.mubr.f32.gmra.mrb[0].mxu0 %v2372
  %v2645 = vpop.f32.mrb[0].mxu0
  %v2646 = vadd.f32 %v94, %v2645
  %v2647 = vpop.f32.mrb[0].mxu0
  %2648 = vmatprep.mubr.f32.mxu0 0.0
  %2649 = vmatmul.mubr.f32.gmra.mrb[0].mxu0 %v2375
  %v2650 = vpop.f32.mrb[0].mxu0
  %v2651 = vadd.f32 %v94, %v2650
  %v2652 = vpop.f32.mrb[0].mxu0
  %2653 = vmatprep.mubr.f32.mxu0 0.0
  %2654 = vmatmul.mubr.f32.gmra.mrb[0].mxu0 %v2378
  %v2655 = vpop.f32.mrb[0].mxu0
  %v2656 = vadd.f32 %v94, %v2655
  %v2657 = vpop.f32.mrb[0].mxu0
  %2658 = vmatprep.mubr.f32.mxu0 0.0
  %2659 = vmatmul.mubr.f32.gmra.mrb[0].mxu0 %v2381
  %v2660 = vpop.f32.mrb[0].mxu0
  %v2661 = vadd.f32 %v94, %v2660
  %v2662 = vpop.f32.mrb[0].mxu0
  %2663 = vmatprep.mubr.f32.mxu0 0.0
  %2664 = vmatmul.mubr.f32.gmra.mrb[0].mxu0 %v2384
  %v2665 = vpop.f32.mrb[0].mxu0
  %v2666 = vadd.f32 %v94, %v2665
  %v2667 = vpop.f32.mrb[0].mxu0
  %2668 = vmatprep.mubr.f32.mxu0 0.0
  %2669 = vmatmul.mubr.f32.gmra.mrb[0].mxu0 %v2387
  %v2670 = vpop.f32.mrb[0].mxu0
  %v2671 = vadd.f32 %v94, %v2670
  %v2672 = vpop.f32.mrb[0].mxu0
  %2673 = vmatprep.mubr.f32.mxu0 0.0
  %2674 = vmatmul.mubr.f32.gmra.mrb[0].mxu0 %v2390
  %v2675 = vpop.f32.mrb[0].mxu0
  %v2676 = vadd.f32 %v94, %v2675
  %v2677 = vpop.f32.mrb[0].mxu0
  %2678 = vmatprep.mubr.f32.mxu0 0.0
  %2679 = vmatmul.mubr.f32.gmra.mrb[0].mxu0 %v2393
  %v2680 = vpop.f32.mrb[0].mxu0
  %v2681 = vadd.f32 %v94, %v2680
  %v2682 = vpop.f32.mrb[0].mxu0
  %2683 = vmatprep.mubr.f32.mxu0 0.0
  %2684 = vmatmul.mubr.f32.gmra.mrb[0].mxu0 %v2396
  %v2685 = vpop.f32.mrb[0].mxu0
  %v2686 = vadd.f32 %v94, %v2685
  %v2687 = vpop.f32.mrb[0].mxu0
  %2688 = vmatprep.mubr.f32.mxu0 0.0
  %2689 = vmatmul.mubr.f32.gmra.mrb[0].mxu0 %v2399
  %v2690 = vpop.f32.mrb[0].mxu0
  %v2691 = vadd.f32 %v94, %v2690
  %v2692 = vpop.f32.mrb[0].mxu0
  %2693 = vmatprep.mubr.f32.mxu0 0.0
  %2694 = vmatmul.mubr.f32.gmra.mrb[0].mxu0 %v2402
  %v2695 = vpop.f32.mrb[0].mxu0
  %v2696 = vadd.f32 %v94, %v2695
  %v2697 = vpop.f32.mrb[0].mxu0
  %2698 = vmatprep.mubr.f32.mxu0 0.0
  %2699 = vmatmul.mubr.f32.gmra.mrb[0].mxu0 %v2405
  %v2700 = vpop.f32.mrb[0].mxu0
  %v2701 = vadd.f32 %v94, %v2700
  %v2702 = vpop.f32.mrb[0].mxu0
  %2703 = vmatprep.mubr.f32.mxu0 0.0
  %2704 = vmatmul.mubr.f32.gmra.mrb[0].mxu0 %v2408
  %v2705 = vpop.f32.mrb[0].mxu0
  %v2706 = vadd.f32 %v94, %v2705
  %v2707 = vpop.f32.mrb[0].mxu0
  %2708 = vmatprep.mubr.f32.mxu0 0.0
  %2709 = vmatmul.mubr.f32.gmra.mrb[0].mxu0 %v2411
  %v2710 = vpop.f32.mrb[0].mxu0
  %v2711 = vadd.f32 %v94, %v2710
  %v2712 = vpop.f32.mrb[0].mxu0
  %2713 = vmatprep.mubr.f32.mxu0 0.0
  %2714 = vmatmul.mubr.f32.gmra.mrb[0].mxu0 %v2414
  %v2715 = vpop.f32.mrb[0].mxu0
  %v2716 = vadd.f32 %v94, %v2715
  %v2717 = vpop.f32.mrb[0].mxu0
  %2718 = vmatprep.mubr.f32.mxu0 0.0
  %2719 = vmatmul.mubr.f32.gmra.mrb[0].mxu0 %v2417
  %v2720 = vpop.f32.mrb[0].mxu0
  %v2721 = vadd.f32 %v94, %v2720
  %v2722 = vpop.f32.mrb[0].mxu0
  %2723 = vmatprep.mubr.f32.mxu0 0.0
  %2724 = vmatmul.mubr.f32.gmra.mrb[0].mxu0 %v2420
  %v2725 = vpop.f32.mrb[0].mxu0
  %v2726 = vadd.f32 %v94, %v2725
  %v2727 = vpop.f32.mrb[0].mxu0
  %2728 = vmatprep.mubr.f32.mxu0 0.0
  %2729 = vmatmul.mubr.f32.gmra.mrb[0].mxu0 %v2423
  %v2730 = vpop.f32.mrb[0].mxu0
  %v2731 = vadd.f32 %v94, %v2730
  %v2732 = vpop.f32.mrb[0].mxu0
  %2733 = vmatprep.mubr.f32.mxu0 0.0
  %2734 = vmatmul.mubr.f32.gmra.mrb[0].mxu0 %v2426
  %v2735 = vpop.f32.mrb[0].mxu0
  %v2736 = vadd.f32 %v94, %v2735
  %v2737 = vpop.f32.mrb[0].mxu0
  %2738 = vmatprep.mubr.f32.mxu0 0.0
  %2739 = vmatmul.mubr.f32.gmra.mrb[0].mxu0 %v2429
  %v2740 = vpop.f32.mrb[0].mxu0
  %v2741 = vadd.f32 %v94, %v2740
  %v2742 = vpop.f32.mrb[0].mxu0
  %2743 = vmatprep.mubr.f32.mxu0 0.0
  %2744 = vmatmul.mubr.f32.gmra.mrb[0].mxu0 %v2432
  %v2745 = vpop.f32.mrb[0].mxu0
  %v2746 = vadd.f32 %v94, %v2745
  %v2747 = vpop.f32.mrb[0].mxu0
  %2748 = vmatprep.mubr.f32.mxu0 0.0
  %2749 = vmatmul.mubr.f32.gmra.mrb[0].mxu0 %v2435
  %v2750 = vpop.f32.mrb[0].mxu0
  %v2751 = vadd.f32 %v94, %v2750
  %v2752 = vpop.f32.mrb[0].mxu0
  %2753 = vmatprep.mubr.f32.mxu0 0.0
  %2754 = vmatmul.mubr.f32.gmra.mrb[0].mxu0 %v2438
  %v2755 = vpop.f32.mrb[0].mxu0
  %v2756 = vadd.f32 %v94, %v2755
  %v2757 = vpop.f32.mrb[0].mxu0
  %2758 = vmatprep.mubr.f32.mxu0 0.0
  %2759 = vmatmul.mubr.f32.gmra.mrb[0].mxu0 %v2441
  %v2760 = vpop.f32.mrb[0].mxu0
  %v2761 = vadd.f32 %v94, %v2760
  %v2762 = vpop.f32.mrb[0].mxu0
  %2763 = vmatprep.mubr.f32.mxu0 0.0
  %2764 = vmatmul.mubr.f32.gmra.mrb[0].mxu0 %v2444
  %v2765 = vpop.f32.mrb[0].mxu0
  %v2766 = vadd.f32 %v94, %v2765
  %v2767 = vpop.f32.mrb[0].mxu0
  %2768 = vmatprep.mubr.f32.mxu0 0.0
  %2769 = vmatmul.mubr.f32.gmra.mrb[0].mxu0 %v2447
  %v2770 = vpop.f32.mrb[0].mxu0
  %v2771 = vadd.f32 %v94, %v2770
  %v2772 = vpop.f32.mrb[0].mxu0
  %2773 = vmatprep.mubr.f32.mxu0 0.0
  %2774 = vmatmul.mubr.f32.gmra.mrb[0].mxu0 %v2450
  %v2775 = vpop.f32.mrb[0].mxu0
  %v2776 = vadd.f32 %v94, %v2775
  %v2777 = vpop.f32.mrb[0].mxu0
  %2778 = vmatprep.mubr.f32.mxu0 0.0
  %2779 = vmatmul.mubr.f32.gmra.mrb[0].mxu0 %v2453
  %v2780 = vpop.f32.mrb[0].mxu0
  %v2781 = vadd.f32 %v94, %v2780
  %v2782 = vpop.f32.mrb[0].mxu0
  %2783 = vmatprep.mubr.f32.mxu0 0.0
  %2784 = vmatmul.mubr.f32.gmra.mrb[0].mxu0 %v2456
  %v2785 = vpop.f32.mrb[0].mxu0
  %v2786 = vadd.f32 %v94, %v2785
  %v2787 = vpop.f32.mrb[0].mxu0
  %2788 = vmatprep.mubr.f32.mxu0 0.0
  %2789 = vmatmul.mubr.f32.gmra.mrb[0].mxu0 %v2459
  %v2790 = vpop.f32.mrb[0].mxu0
  %v2791 = vadd.f32 %v94, %v2790
  %v2792 = vpop.f32.mrb[0].mxu0
  %2793 = vmatprep.mubr.f32.mxu0 0.0
  %2794 = vmatmul.mubr.f32.gmra.mrb[0].mxu0 %v2462
  %v2795 = vpop.f32.mrb[0].mxu0
  %v2796 = vadd.f32 %v94, %v2795
  %v2797 = vpop.f32.mrb[0].mxu0
  %2798 = vmatprep.mubr.f32.mxu0 0.0
  %2799 = vmatmul.mubr.f32.gmra.mrb[0].mxu0 %v2465
  %v2800 = vpop.f32.mrb[0].mxu0
  %v2801 = vadd.f32 %v94, %v2800
  %v2802 = vpop.f32.mrb[0].mxu0
  %2803 = vmatprep.mubr.f32.mxu0 0.0
  %2804 = vmatmul.mubr.f32.gmra.mrb[0].mxu0 %v2468
  %v2805 = vpop.f32.mrb[0].mxu0
  %v2806 = vadd.f32 %v94, %v2805
  %v2807 = vpop.f32.mrb[0].mxu0
  %2808 = vmatprep.mubr.f32.mxu0 0.0
  %2809 = vmatmul.mubr.f32.gmra.mrb[0].mxu0 %v2471
  %v2810 = vpop.f32.mrb[0].mxu0
  %v2811 = vadd.f32 %v94, %v2810
  %v2812 = vpop.f32.mrb[0].mxu0
  %2813 = vmatprep.mubr.f32.mxu0 0.0
  %2814 = vmatmul.mubr.f32.gmra.mrb[0].mxu0 %v2474
  %v2815 = vpop.f32.mrb[0].mxu0
  %v2816 = vadd.f32 %v94, %v2815
  %v2817 = vpop.f32.mrb[0].mxu0
  %2818 = vmatprep.mubr.f32.mxu0 0.0
  %2819 = vmatmul.mubr.f32.gmra.mrb[0].mxu0 %v2477
  %v2820 = vpop.f32.mrb[0].mxu0
  %v2821 = vadd.f32 %v94, %v2820
  %v2822 = vpop.f32.mrb[0].mxu0
  %2823 = vmatprep.mubr.f32.mxu0 0.0
  %2824 = vmatmul.mubr.f32.gmra.mrb[0].mxu0 %v2480
  %v2825 = vpop.f32.mrb[0].mxu0
  %v2826 = vadd.f32 %v94, %v2825
  %v2827 = vpop.f32.mrb[0].mxu0
  %2828 = vmatprep.mubr.f32.mxu0 0.0
  %2829 = vmatmul.mubr.f32.gmra.mrb[0].mxu0 %v2483
  %v2830 = vpop.f32.mrb[0].mxu0
  %v2831 = vadd.f32 %v94, %v2830
  %v2832 = vpop.f32.mrb[0].mxu0
  %2833 = vmatprep.mubr.f32.mxu0 0.0
  %2834 = vmatmul.mubr.f32.gmra.mrb[0].mxu0 %v2486
  %v2835 = vpop.f32.mrb[0].mxu0
  %v2836 = vadd.f32 %v94, %v2835
  %v2837 = vpop.f32.mrb[0].mxu0
  %2838 = vmatprep.mubr.f32.mxu0 0.0
  %2839 = vmatmul.mubr.f32.gmra.mrb[0].mxu0 %v2489
  %v2840 = vpop.f32.mrb[0].mxu0
  %v2841 = vadd.f32 %v94, %v2840
  %v2842 = vpop.f32.mrb[0].mxu0
  %2843 = vmatprep.mubr.f32.mxu0 0.0
  %2844 = vmatmul.mubr.f32.gmra.mrb[0].mxu0 %v2492
  %v2845 = vpop.f32.mrb[0].mxu0
  %v2846 = vadd.f32 %v94, %v2845
  %v2847 = vpop.f32.mrb[0].mxu0
  %2848 = vmatprep.mubr.f32.mxu0 0.0
  %2849 = vmatmul.mubr.f32.gmra.mrb[0].mxu0 %v2495
  %v2850 = vpop.f32.mrb[0].mxu0
  %v2851 = vadd.f32 %v94, %v2850
  %v2852 = vpop.f32.mrb[0].mxu0
  %2853 = vmatprep.mubr.f32.mxu0 0.0
  %2854 = vmatmul.mubr.f32.gmra.mrb[0].mxu0 %v2498
  %v2855 = vpop.f32.mrb[0].mxu0
  %v2856 = vadd.f32 %v94, %v2855
  %v2857 = vpop.f32.mrb[0].mxu0
  %2858 = vmatprep.mubr.f32.mxu0 0.0
  %2859 = vmatmul.mubr.f32.gmra.mrb[0].mxu0 %v2501
  %v2860 = vpop.f32.mrb[0].mxu0
  %v2861 = vadd.f32 %v94, %v2860
  %v2862 = vpop.f32.mrb[0].mxu0
  %2863 = vmatprep.mubr.f32.mxu0 0.0
  %2864 = vmatmul.mubr.f32.gmra.mrb[0].mxu0 %v2504
  %v2865 = vpop.f32.mrb[0].mxu0
  %v2866 = vadd.f32 %v94, %v2865
  %v2867 = vpop.f32.mrb[0].mxu0
  %2868 = vmatprep.mubr.f32.mxu0 0.0
  %2869 = vmatmul.mubr.f32.gmra.mrb[0].mxu0 %v2507
  %v2870 = vpop.f32.mrb[0].mxu0
  %v2871 = vadd.f32 %v94, %v2870
  %v2872 = vpop.f32.mrb[0].mxu0
  %2873 = vmatprep.mubr.f32.mxu0 0.0
  %2874 = vmatmul.mubr.f32.gmra.mrb[0].mxu0 %v2510
  %v2875 = vpop.f32.mrb[0].mxu0
  %v2876 = vadd.f32 %v94, %v2875
  %v2877 = vpop.f32.mrb[0].mxu0
  %2878 = vmatprep.mubr.f32.mxu0 0.0
  %2879 = vmatmul.mubr.f32.gmra.mrb[0].mxu0 %v2513
  %v2880 = vpop.f32.mrb[0].mxu0
  %v2881 = vadd.f32 %v94, %v2880
  %v2882 = vpop.f32.mrb[0].mxu0
  %2883 = vmatprep.mubr.f32.mxu0 0.0
  %2884 = vmatmul.mubr.f32.gmra.mrb[0].mxu0 %v2516
  %v2885 = vpop.f32.mrb[0].mxu0
  %v2886 = vadd.f32 %v94, %v2885
  %v2887 = vpop.f32.mrb[0].mxu0
  %2888 = vmatprep.mubr.f32.mxu0 0.0
  %2889 = vmatmul.mubr.f32.gmra.mrb[0].mxu0 %v2519
  %v2890 = vpop.f32.mrb[0].mxu0
  %v2891 = vadd.f32 %v94, %v2890
  %v2892 = vpop.f32.mrb[0].mxu0
  %2893 = vmatprep.mubr.f32.mxu0 0.0
  %2894 = vmatmul.mubr.f32.gmra.mrb[0].mxu0 %v2522
  %v2895 = vpop.f32.mrb[0].mxu0
  %v2896 = vadd.f32 %v94, %v2895
  %v2897 = vpop.f32.mrb[0].mxu0
  %2898 = vmatprep.mubr.f32.mxu0 0.0
  %2899 = vmatmul.mubr.f32.gmra.mrb[0].mxu0 %v2525
  %v2900 = vpop.f32.mrb[0].mxu0
  %v2901 = vadd.f32 %v94, %v2900
  %v2902 = vpop.f32.mrb[0].mxu0
  %2903 = vmatprep.mubr.f32.mxu0 0.0
  %2904 = vmatmul.mubr.f32.gmra.mrb[0].mxu0 %v2528
  %v2905 = vpop.f32.mrb[0].mxu0
  %v2906 = vadd.f32 %v94, %v2905
  %v2907 = vpop.f32.mrb[0].mxu0
  %2908 = vmatprep.mubr.f32.mxu0 0.0
  %2909 = vmatmul.mubr.f32.gmra.mrb[0].mxu0 %v2531
  %v2910 = vpop.f32.mrb[0].mxu0
  %v2911 = vadd.f32 %v94, %v2910
  %v2912 = vpop.f32.mrb[0].mxu0
  %2913 = vmatprep.mubr.f32.mxu0 0.0
  %2914 = vmatmul.mubr.f32.gmra.mrb[0].mxu0 %v2534
  %v2915 = vpop.f32.mrb[0].mxu0
  %v2916 = vadd.f32 %v94, %v2915
  %v2917 = vpop.f32.mrb[0].mxu0
  %2918 = vmatprep.mubr.f32.mxu0 0.0
  %2919 = vmatmul.mubr.f32.gmra.mrb[0].mxu0 %v2537
  %v2920 = vpop.f32.mrb[0].mxu0
  %v2921 = vadd.f32 %v94, %v2920
  %v2922 = vpop.f32.mrb[0].mxu0
  %2923 = vdwg.mxu0
  %v2924 = vmax.f32 %v2606, 0.0
  %v2925 = vmax.f32 %v2611, 0.0
  %v2926 = vmax.f32 %v2616, 0.0
  %v2927 = vmax.f32 %v2621, 0.0
  %v2928 = vmax.f32 %v2626, 0.0
  %v2929 = vmax.f32 %v2631, 0.0
  %v2930 = vmax.f32 %v2636, 0.0
  %v2931 = vmax.f32 %v2641, 0.0
  %v2932 = vmax.f32 %v2646, 0.0
  %v2933 = vmax.f32 %v2651, 0.0
  %v2934 = vmax.f32 %v2656, 0.0
  %v2935 = vmax.f32 %v2661, 0.0
  %v2936 = vmax.f32 %v2666, 0.0
  %v2937 = vmax.f32 %v2671, 0.0
  %v2938 = vmax.f32 %v2676, 0.0
  %v2939 = vmax.f32 %v2681, 0.0
  %v2940 = vmax.f32 %v2686, 0.0
  %v2941 = vmax.f32 %v2691, 0.0
  %v2942 = vmax.f32 %v2696, 0.0
  %v2943 = vmax.f32 %v2701, 0.0
  %v2944 = vmax.f32 %v2706, 0.0
  %v2945 = vmax.f32 %v2711, 0.0
  %v2946 = vmax.f32 %v2716, 0.0
  %v2947 = vmax.f32 %v2721, 0.0
  %v2948 = vmax.f32 %v2726, 0.0
  %v2949 = vmax.f32 %v2731, 0.0
  %v2950 = vmax.f32 %v2736, 0.0
  %v2951 = vmax.f32 %v2741, 0.0
  %v2952 = vmax.f32 %v2746, 0.0
  %v2953 = vmax.f32 %v2751, 0.0
  %v2954 = vmax.f32 %v2756, 0.0
  %v2955 = vmax.f32 %v2761, 0.0
  %v2956 = vmax.f32 %v2766, 0.0
  %v2957 = vmax.f32 %v2771, 0.0
  %v2958 = vmax.f32 %v2776, 0.0
  %v2959 = vmax.f32 %v2781, 0.0
  %v2960 = vmax.f32 %v2786, 0.0
  %v2961 = vmax.f32 %v2791, 0.0
  %v2962 = vmax.f32 %v2796, 0.0
  %v2963 = vmax.f32 %v2801, 0.0
  %v2964 = vmax.f32 %v2806, 0.0
  %v2965 = vmax.f32 %v2811, 0.0
  %v2966 = vmax.f32 %v2816, 0.0
  %v2967 = vmax.f32 %v2821, 0.0
  %v2968 = vmax.f32 %v2826, 0.0
  %v2969 = vmax.f32 %v2831, 0.0
  %v2970 = vmax.f32 %v2836, 0.0
  %v2971 = vmax.f32 %v2841, 0.0
  %v2972 = vmax.f32 %v2846, 0.0
  %v2973 = vmax.f32 %v2851, 0.0
  %v2974 = vmax.f32 %v2856, 0.0
  %v2975 = vmax.f32 %v2861, 0.0
  %v2976 = vmax.f32 %v2866, 0.0
  %v2977 = vmax.f32 %v2871, 0.0
  %v2978 = vmax.f32 %v2876, 0.0
  %v2979 = vmax.f32 %v2881, 0.0
  %v2980 = vmax.f32 %v2886, 0.0
  %v2981 = vmax.f32 %v2891, 0.0
  %v2982 = vmax.f32 %v2896, 0.0
  %v2983 = vmax.f32 %v2901, 0.0
  %v2984 = vmax.f32 %v2906, 0.0
  %v2985 = vmax.f32 %v2911, 0.0
  %v2986 = vmax.f32 %v2916, 0.0
  %v2987 = vmax.f32 %v2921, 0.0
  %v2988 = vmax.f32 %v2218, %v2924
  %v2989 = vmax.f32 %v2219, %v2925
  %v2990 = vmax.f32 %v2220, %v2926
  %v2991 = vmax.f32 %v2221, %v2927
  %v2992 = vmax.f32 %v2222, %v2928
  %v2993 = vmax.f32 %v2223, %v2929
  %v2994 = vmax.f32 %v2224, %v2930
  %v2995 = vmax.f32 %v2225, %v2931
  %v2996 = vmax.f32 %v2226, %v2932
  %v2997 = vmax.f32 %v2227, %v2933
  %v2998 = vmax.f32 %v2228, %v2934
  %v2999 = vmax.f32 %v2229, %v2935
  %v3000 = vmax.f32 %v2230, %v2936
  %v3001 = vmax.f32 %v2231, %v2937
  %v3002 = vmax.f32 %v2232, %v2938
  %v3003 = vmax.f32 %v2233, %v2939
  %v3004 = vmax.f32 %v2234, %v2940
  %v3005 = vmax.f32 %v2235, %v2941
  %v3006 = vmax.f32 %v2236, %v2942
  %v3007 = vmax.f32 %v2237, %v2943
  %v3008 = vmax.f32 %v2238, %v2944
  %v3009 = vmax.f32 %v2239, %v2945
  %v3010 = vmax.f32 %v2240, %v2946
  %v3011 = vmax.f32 %v2241, %v2947
  %v3012 = vmax.f32 %v2242, %v2948
  %v3013 = vmax.f32 %v2243, %v2949
  %v3014 = vmax.f32 %v2244, %v2950
  %v3015 = vmax.f32 %v2245, %v2951
  %v3016 = vmax.f32 %v2246, %v2952
  %v3017 = vmax.f32 %v2247, %v2953
  %v3018 = vmax.f32 %v2248, %v2954
  %v3019 = vmax.f32 %v2249, %v2955
  %v3020 = vmax.f32 %v2250, %v2956
  %v3021 = vmax.f32 %v2251, %v2957
  %v3022 = vmax.f32 %v2252, %v2958
  %v3023 = vmax.f32 %v2253, %v2959
  %v3024 = vmax.f32 %v2254, %v2960
  %v3025 = vmax.f32 %v2255, %v2961
  %v3026 = vmax.f32 %v2256, %v2962
  %v3027 = vmax.f32 %v2257, %v2963
  %v3028 = vmax.f32 %v2258, %v2964
  %v3029 = vmax.f32 %v2259, %v2965
  %v3030 = vmax.f32 %v2260, %v2966
  %v3031 = vmax.f32 %v2261, %v2967
  %v3032 = vmax.f32 %v2262, %v2968
  %v3033 = vmax.f32 %v2263, %v2969
  %v3034 = vmax.f32 %v2264, %v2970
  %v3035 = vmax.f32 %v2265, %v2971
  %v3036 = vmax.f32 %v2266, %v2972
  %v3037 = vmax.f32 %v2267, %v2973
  %v3038 = vmax.f32 %v2268, %v2974
  %v3039 = vmax.f32 %v2269, %v2975
  %v3040 = vmax.f32 %v2270, %v2976
  %v3041 = vmax.f32 %v2271, %v2977
  %v3042 = vmax.f32 %v2272, %v2978
  %v3043 = vmax.f32 %v2273, %v2979
  %v3044 = vmax.f32 %v2274, %v2980
  %v3045 = vmax.f32 %v2275, %v2981
  %v3046 = vmax.f32 %v2276, %v2982
  %v3047 = vmax.f32 %v2277, %v2983
  %v3048 = vmax.f32 %v2278, %v2984
  %v3049 = vmax.f32 %v2279, %v2985
  %v3050 = vmax.f32 %v2280, %v2986
  %v3051 = vmax.f32 %v2281, %v2987
  %v3052 = vld [vmem:[%s1] sm:$0xff]
  %v3053 = vld [vmem:[%s1 + $0x8] sm:$0xff]
  %v3054 = vld [vmem:[%s1 + $0x10] sm:$0xff]
  %v3055 = vld [vmem:[%s1 + $0x18] sm:$0xff]
  %v3056 = vld [vmem:[%s1 + $0x20] sm:$0xff]
  %v3057 = vld [vmem:[%s1 + $0x28] sm:$0xff]
  %v3058 = vld [vmem:[%s1 + $0x30] sm:$0xff]
  %v3059 = vld [vmem:[%s1 + $0x38] sm:$0xff]
  %v3060 = vld [vmem:[%s1 + $0x40] sm:$0xff]
  %v3061 = vld [vmem:[%s1 + $0x48] sm:$0xff]
  %v3062 = vld [vmem:[%s1 + $0x50] sm:$0xff]
  %v3063 = vld [vmem:[%s1 + $0x58] sm:$0xff]
  %v3064 = vld [vmem:[%s1 + $0x60] sm:$0xff]
  %v3065 = vld [vmem:[%s1 + $0x68] sm:$0xff]
  %v3066 = vld [vmem:[%s1 + $0x70] sm:$0xff]
  %v3067 = vld [vmem:[%s1 + $0x78] sm:$0xff]
  %v3068 = vld [vmem:[%s1 + $0x80] sm:$0xff]
  %v3069 = vld [vmem:[%s1 + $0x88] sm:$0xff]
  %v3070 = vld [vmem:[%s1 + $0x90] sm:$0xff]
  %v3071 = vld [vmem:[%s1 + $0x98] sm:$0xff]
  %v3072 = vld [vmem:[%s1 + $0xa0] sm:$0xff]
  %v3073 = vld [vmem:[%s1 + $0xa8] sm:$0xff]
  %v3074 = vld [vmem:[%s1 + $0xb0] sm:$0xff]
  %v3075 = vld [vmem:[%s1 + $0xb8] sm:$0xff]
  %v3076 = vld [vmem:[%s1 + $0xc0] sm:$0xff]
  %v3077 = vld [vmem:[%s1 + $0xc8] sm:$0xff]
  %v3078 = vld [vmem:[%s1 + $0xd0] sm:$0xff]
  %v3079 = vld [vmem:[%s1 + $0xd8] sm:$0xff]
  %v3080 = vld [vmem:[%s1 + $0xe0] sm:$0xff]
  %v3081 = vld [vmem:[%s1 + $0xe8] sm:$0xff]
  %v3082 = vld [vmem:[%s1 + $0xf0] sm:$0xff]
  %v3083 = vld [vmem:[%s1 + $0xf8] sm:$0xff]
  %v3084 = vld [vmem:[%s1 + $0x100] sm:$0xff]
  %v3085 = vld [vmem:[%s1 + $0x108] sm:$0xff]
  %v3086 = vld [vmem:[%s1 + $0x110] sm:$0xff]
  %v3087 = vld [vmem:[%s1 + $0x118] sm:$0xff]
  %v3088 = vld [vmem:[%s1 + $0x120] sm:$0xff]
  %v3089 = vld [vmem:[%s1 + $0x128] sm:$0xff]
  %v3090 = vld [vmem:[%s1 + $0x130] sm:$0xff]
  %v3091 = vld [vmem:[%s1 + $0x138] sm:$0xff]
  %v3092 = vld [vmem:[%s1 + $0x140] sm:$0xff]
  %v3093 = vld [vmem:[%s1 + $0x148] sm:$0xff]
  %v3094 = vld [vmem:[%s1 + $0x150] sm:$0xff]
  %v3095 = vld [vmem:[%s1 + $0x158] sm:$0xff]
  %v3096 = vld [vmem:[%s1 + $0x160] sm:$0xff]
  %v3097 = vld [vmem:[%s1 + $0x168] sm:$0xff]
  %v3098 = vld [vmem:[%s1 + $0x170] sm:$0xff]
  %v3099 = vld [vmem:[%s1 + $0x178] sm:$0xff]
  %v3100 = vld [vmem:[%s1 + $0x180] sm:$0xff]
  %v3101 = vld [vmem:[%s1 + $0x188] sm:$0xff]
  %v3102 = vld [vmem:[%s1 + $0x190] sm:$0xff]
  %v3103 = vld [vmem:[%s1 + $0x198] sm:$0xff]
  %v3104 = vld [vmem:[%s1 + $0x1a0] sm:$0xff]
  %v3105 = vld [vmem:[%s1 + $0x1a8] sm:$0xff]
  %v3106 = vld [vmem:[%s1 + $0x1b0] sm:$0xff]
  %v3107 = vld [vmem:[%s1 + $0x1b8] sm:$0xff]
  %v3108 = vld [vmem:[%s1 + $0x1c0] sm:$0xff]
  %v3109 = vld [vmem:[%s1 + $0x1c8] sm:$0xff]
  %v3110 = vld [vmem:[%s1 + $0x1d0] sm:$0xff]
  %v3111 = vld [vmem:[%s1 + $0x1d8] sm:$0xff]
  %v3112 = vld [vmem:[%s1 + $0x1e0] sm:$0xff]
  %v3113 = vld [vmem:[%s1 + $0x1e8] sm:$0xff]
  %v3114 = vld [vmem:[%s1 + $0x1f0] sm:$0xff]
  %v3115 = vld [vmem:[%s1 + $0x1f8] sm:$0xff]
  %3117 = vset.pattern.permute.xlu0 0
  %3118 = vperm.xlu0 %3117, %v3052
  %v3119 = vpop.permute.xlu0 %3118
  %3122 = vset.pattern.permute.xlu0 0
  %3123 = vperm.xlu0 %3122, %v3053
  %v3124 = vpop.permute.xlu0 %3123
  %3127 = vset.pattern.permute.xlu0 0
  %3128 = vperm.xlu0 %3127, %v3054
  %v3129 = vpop.permute.xlu0 %3128
  %3132 = vset.pattern.permute.xlu0 0
  %3133 = vperm.xlu0 %3132, %v3055
  %v3134 = vpop.permute.xlu0 %3133
  %3137 = vset.pattern.permute.xlu0 0
  %3138 = vperm.xlu0 %3137, %v3056
  %v3139 = vpop.permute.xlu0 %3138
  %3142 = vset.pattern.permute.xlu0 0
  %3143 = vperm.xlu0 %3142, %v3057
  %v3144 = vpop.permute.xlu0 %3143
  %3147 = vset.pattern.permute.xlu0 0
  %3148 = vperm.xlu0 %3147, %v3058
  %v3149 = vpop.permute.xlu0 %3148
  %3152 = vset.pattern.permute.xlu0 0
  %3153 = vperm.xlu0 %3152, %v3059
  %v3154 = vpop.permute.xlu0 %3153
  %3157 = vset.pattern.permute.xlu0 0
  %3158 = vperm.xlu0 %3157, %v3060
  %v3159 = vpop.permute.xlu0 %3158
  %3162 = vset.pattern.permute.xlu0 0
  %3163 = vperm.xlu0 %3162, %v3061
  %v3164 = vpop.permute.xlu0 %3163
  %3167 = vset.pattern.permute.xlu0 0
  %3168 = vperm.xlu0 %3167, %v3062
  %v3169 = vpop.permute.xlu0 %3168
  %3172 = vset.pattern.permute.xlu0 0
  %3173 = vperm.xlu0 %3172, %v3063
  %v3174 = vpop.permute.xlu0 %3173
  %3177 = vset.pattern.permute.xlu0 0
  %3178 = vperm.xlu0 %3177, %v3064
  %v3179 = vpop.permute.xlu0 %3178
  %3182 = vset.pattern.permute.xlu0 0
  %3183 = vperm.xlu0 %3182, %v3065
  %v3184 = vpop.permute.xlu0 %3183
  %3187 = vset.pattern.permute.xlu0 0
  %3188 = vperm.xlu0 %3187, %v3066
  %v3189 = vpop.permute.xlu0 %3188
  %3192 = vset.pattern.permute.xlu0 0
  %3193 = vperm.xlu0 %3192, %v3067
  %v3194 = vpop.permute.xlu0 %3193
  %3197 = vset.pattern.permute.xlu0 0
  %3198 = vperm.xlu0 %3197, %v3068
  %v3199 = vpop.permute.xlu0 %3198
  %3202 = vset.pattern.permute.xlu0 0
  %3203 = vperm.xlu0 %3202, %v3069
  %v3204 = vpop.permute.xlu0 %3203
  %3207 = vset.pattern.permute.xlu0 0
  %3208 = vperm.xlu0 %3207, %v3070
  %v3209 = vpop.permute.xlu0 %3208
  %3212 = vset.pattern.permute.xlu0 0
  %3213 = vperm.xlu0 %3212, %v3071
  %v3214 = vpop.permute.xlu0 %3213
  %3217 = vset.pattern.permute.xlu0 0
  %3218 = vperm.xlu0 %3217, %v3072
  %v3219 = vpop.permute.xlu0 %3218
  %3222 = vset.pattern.permute.xlu0 0
  %3223 = vperm.xlu0 %3222, %v3073
  %v3224 = vpop.permute.xlu0 %3223
  %3227 = vset.pattern.permute.xlu0 0
  %3228 = vperm.xlu0 %3227, %v3074
  %v3229 = vpop.permute.xlu0 %3228
  %3232 = vset.pattern.permute.xlu0 0
  %3233 = vperm.xlu0 %3232, %v3075
  %v3234 = vpop.permute.xlu0 %3233
  %3237 = vset.pattern.permute.xlu0 0
  %3238 = vperm.xlu0 %3237, %v3076
  %v3239 = vpop.permute.xlu0 %3238
  %3242 = vset.pattern.permute.xlu0 0
  %3243 = vperm.xlu0 %3242, %v3077
  %v3244 = vpop.permute.xlu0 %3243
  %3247 = vset.pattern.permute.xlu0 0
  %3248 = vperm.xlu0 %3247, %v3078
  %v3249 = vpop.permute.xlu0 %3248
  %3252 = vset.pattern.permute.xlu0 0
  %3253 = vperm.xlu0 %3252, %v3079
  %v3254 = vpop.permute.xlu0 %3253
  %3257 = vset.pattern.permute.xlu0 0
  %3258 = vperm.xlu0 %3257, %v3080
  %v3259 = vpop.permute.xlu0 %3258
  %3262 = vset.pattern.permute.xlu0 0
  %3263 = vperm.xlu0 %3262, %v3081
  %v3264 = vpop.permute.xlu0 %3263
  %3267 = vset.pattern.permute.xlu0 0
  %3268 = vperm.xlu0 %3267, %v3082
  %v3269 = vpop.permute.xlu0 %3268
  %3272 = vset.pattern.permute.xlu0 0
  %3273 = vperm.xlu0 %3272, %v3083
  %v3274 = vpop.permute.xlu0 %3273
  %3277 = vset.pattern.permute.xlu0 0
  %3278 = vperm.xlu0 %3277, %v3084
  %v3279 = vpop.permute.xlu0 %3278
  %3282 = vset.pattern.permute.xlu0 0
  %3283 = vperm.xlu0 %3282, %v3085
  %v3284 = vpop.permute.xlu0 %3283
  %3287 = vset.pattern.permute.xlu0 0
  %3288 = vperm.xlu0 %3287, %v3086
  %v3289 = vpop.permute.xlu0 %3288
  %3292 = vset.pattern.permute.xlu0 0
  %3293 = vperm.xlu0 %3292, %v3087
  %v3294 = vpop.permute.xlu0 %3293
  %3297 = vset.pattern.permute.xlu0 0
  %3298 = vperm.xlu0 %3297, %v3088
  %v3299 = vpop.permute.xlu0 %3298
  %3302 = vset.pattern.permute.xlu0 0
  %3303 = vperm.xlu0 %3302, %v3089
  %v3304 = vpop.permute.xlu0 %3303
  %3307 = vset.pattern.permute.xlu0 0
  %3308 = vperm.xlu0 %3307, %v3090
  %v3309 = vpop.permute.xlu0 %3308
  %3312 = vset.pattern.permute.xlu0 0
  %3313 = vperm.xlu0 %3312, %v3091
  %v3314 = vpop.permute.xlu0 %3313
  %3317 = vset.pattern.permute.xlu0 0
  %3318 = vperm.xlu0 %3317, %v3092
  %v3319 = vpop.permute.xlu0 %3318
  %3322 = vset.pattern.permute.xlu0 0
  %3323 = vperm.xlu0 %3322, %v3093
  %v3324 = vpop.permute.xlu0 %3323
  %3327 = vset.pattern.permute.xlu0 0
  %3328 = vperm.xlu0 %3327, %v3094
  %v3329 = vpop.permute.xlu0 %3328
  %3332 = vset.pattern.permute.xlu0 0
  %3333 = vperm.xlu0 %3332, %v3095
  %v3334 = vpop.permute.xlu0 %3333
  %3337 = vset.pattern.permute.xlu0 0
  %3338 = vperm.xlu0 %3337, %v3096
  %v3339 = vpop.permute.xlu0 %3338
  %3342 = vset.pattern.permute.xlu0 0
  %3343 = vperm.xlu0 %3342, %v3097
  %v3344 = vpop.permute.xlu0 %3343
  %3347 = vset.pattern.permute.xlu0 0
  %3348 = vperm.xlu0 %3347, %v3098
  %v3349 = vpop.permute.xlu0 %3348
  %3352 = vset.pattern.permute.xlu0 0
  %3353 = vperm.xlu0 %3352, %v3099
  %v3354 = vpop.permute.xlu0 %3353
  %3357 = vset.pattern.permute.xlu0 0
  %3358 = vperm.xlu0 %3357, %v3100
  %v3359 = vpop.permute.xlu0 %3358
  %3362 = vset.pattern.permute.xlu0 0
  %3363 = vperm.xlu0 %3362, %v3101
  %v3364 = vpop.permute.xlu0 %3363
  %3367 = vset.pattern.permute.xlu0 0
  %3368 = vperm.xlu0 %3367, %v3102
  %v3369 = vpop.permute.xlu0 %3368
  %3372 = vset.pattern.permute.xlu0 0
  %3373 = vperm.xlu0 %3372, %v3103
  %v3374 = vpop.permute.xlu0 %3373
  %3377 = vset.pattern.permute.xlu0 0
  %3378 = vperm.xlu0 %3377, %v3104
  %v3379 = vpop.permute.xlu0 %3378
  %3382 = vset.pattern.permute.xlu0 0
  %3383 = vperm.xlu0 %3382, %v3105
  %v3384 = vpop.permute.xlu0 %3383
  %3387 = vset.pattern.permute.xlu0 0
  %3388 = vperm.xlu0 %3387, %v3106
  %v3389 = vpop.permute.xlu0 %3388
  %3392 = vset.pattern.permute.xlu0 0
  %3393 = vperm.xlu0 %3392, %v3107
  %v3394 = vpop.permute.xlu0 %3393
  %3397 = vset.pattern.permute.xlu0 0
  %3398 = vperm.xlu0 %3397, %v3108
  %v3399 = vpop.permute.xlu0 %3398
  %3402 = vset.pattern.permute.xlu0 0
  %3403 = vperm.xlu0 %3402, %v3109
  %v3404 = vpop.permute.xlu0 %3403
  %3407 = vset.pattern.permute.xlu0 0
  %3408 = vperm.xlu0 %3407, %v3110
  %v3409 = vpop.permute.xlu0 %3408
  %3412 = vset.pattern.permute.xlu0 0
  %3413 = vperm.xlu0 %3412, %v3111
  %v3414 = vpop.permute.xlu0 %3413
  %3417 = vset.pattern.permute.xlu0 0
  %3418 = vperm.xlu0 %3417, %v3112
  %v3419 = vpop.permute.xlu0 %3418
  %3422 = vset.pattern.permute.xlu0 0
  %3423 = vperm.xlu0 %3422, %v3113
  %v3424 = vpop.permute.xlu0 %3423
  %3427 = vset.pattern.permute.xlu0 0
  %3428 = vperm.xlu0 %3427, %v3114
  %v3429 = vpop.permute.xlu0 %3428
  %3432 = vset.pattern.permute.xlu0 0
  %3433 = vperm.xlu0 %3432, %v3115
  %v3434 = vpop.permute.xlu0 %3433
  %v3436 = vmul.f32 %v2988, %v3119
  %v3437 = vmul.f32 %v2989, %v3124
  %v3438 = vmul.f32 %v2990, %v3129
  %v3439 = vmul.f32 %v2991, %v3134
  %v3440 = vmul.f32 %v2992, %v3139
  %v3441 = vmul.f32 %v2993, %v3144
  %v3442 = vmul.f32 %v2994, %v3149
  %v3443 = vmul.f32 %v2995, %v3154
  %v3444 = vmul.f32 %v2996, %v3159
  %v3445 = vmul.f32 %v2997, %v3164
  %v3446 = vmul.f32 %v2998, %v3169
  %v3447 = vmul.f32 %v2999, %v3174
  %v3448 = vmul.f32 %v3000, %v3179
  %v3449 = vmul.f32 %v3001, %v3184
  %v3450 = vmul.f32 %v3002, %v3189
  %v3451 = vmul.f32 %v3003, %v3194
  %v3452 = vmul.f32 %v3004, %v3199
  %v3453 = vmul.f32 %v3005, %v3204
  %v3454 = vmul.f32 %v3006, %v3209
  %v3455 = vmul.f32 %v3007, %v3214
  %v3456 = vmul.f32 %v3008, %v3219
  %v3457 = vmul.f32 %v3009, %v3224
  %v3458 = vmul.f32 %v3010, %v3229
  %v3459 = vmul.f32 %v3011, %v3234
  %v3460 = vmul.f32 %v3012, %v3239
  %v3461 = vmul.f32 %v3013, %v3244
  %v3462 = vmul.f32 %v3014, %v3249
  %v3463 = vmul.f32 %v3015, %v3254
  %v3464 = vmul.f32 %v3016, %v3259
  %v3465 = vmul.f32 %v3017, %v3264
  %v3466 = vmul.f32 %v3018, %v3269
  %v3467 = vmul.f32 %v3019, %v3274
  %v3468 = vmul.f32 %v3020, %v3279
  %v3469 = vmul.f32 %v3021, %v3284
  %v3470 = vmul.f32 %v3022, %v3289
  %v3471 = vmul.f32 %v3023, %v3294
  %v3472 = vmul.f32 %v3024, %v3299
  %v3473 = vmul.f32 %v3025, %v3304
  %v3474 = vmul.f32 %v3026, %v3309
  %v3475 = vmul.f32 %v3027, %v3314
  %v3476 = vmul.f32 %v3028, %v3319
  %v3477 = vmul.f32 %v3029, %v3324
  %v3478 = vmul.f32 %v3030, %v3329
  %v3479 = vmul.f32 %v3031, %v3334
  %v3480 = vmul.f32 %v3032, %v3339
  %v3481 = vmul.f32 %v3033, %v3344
  %v3482 = vmul.f32 %v3034, %v3349
  %v3483 = vmul.f32 %v3035, %v3354
  %v3484 = vmul.f32 %v3036, %v3359
  %v3485 = vmul.f32 %v3037, %v3364
  %v3486 = vmul.f32 %v3038, %v3369
  %v3487 = vmul.f32 %v3039, %v3374
  %v3488 = vmul.f32 %v3040, %v3379
  %v3489 = vmul.f32 %v3041, %v3384
  %v3490 = vmul.f32 %v3042, %v3389
  %v3491 = vmul.f32 %v3043, %v3394
  %v3492 = vmul.f32 %v3044, %v3399
  %v3493 = vmul.f32 %v3045, %v3404
  %v3494 = vmul.f32 %v3046, %v3409
  %v3495 = vmul.f32 %v3047, %v3414
  %v3496 = vmul.f32 %v3048, %v3419
  %v3497 = vmul.f32 %v3049, %v3424
  %v3498 = vmul.f32 %v3050, %v3429
  %v3499 = vmul.f32 %v3051, %v3434
  %vm3500 = vcmask 261120
  %3501 = vst.msk [vmem:[#allocation2] sm:$0xff] %vm3500, 0.0
  %3502 = vst.msk [vmem:[#allocation2 + $0x8] sm:$0xff] %vm3500, 0.0
  %3503 = vst.msk [vmem:[#allocation2 + $0x10] sm:$0xff] %vm3500, 0.0
  %3504 = vst.msk [vmem:[#allocation2 + $0x18] sm:$0xff] %vm3500, 0.0
  %3505 = vst.msk [vmem:[#allocation2 + $0x20] sm:$0xff] %vm3500, 0.0
  %3506 = vst.msk [vmem:[#allocation2 + $0x28] sm:$0xff] %vm3500, 0.0
  %3507 = vst.msk [vmem:[#allocation2 + $0x30] sm:$0xff] %vm3500, 0.0
  %3508 = vst.msk [vmem:[#allocation2 + $0x38] sm:$0xff] %vm3500, 0.0
  %3509 = vst.msk [vmem:[#allocation2 + $0x40] sm:$0xff] %vm3500, 0.0
  %3510 = vst.msk [vmem:[#allocation2 + $0x48] sm:$0xff] %vm3500, 0.0
  %3511 = vst.msk [vmem:[#allocation2 + $0x50] sm:$0xff] %vm3500, 0.0
  %3512 = vst.msk [vmem:[#allocation2 + $0x58] sm:$0xff] %vm3500, 0.0
  %3513 = vst.msk [vmem:[#allocation2 + $0x60] sm:$0xff] %vm3500, 0.0
  %3514 = vst.msk [vmem:[#allocation2 + $0x68] sm:$0xff] %vm3500, 0.0
  %3515 = vst.msk [vmem:[#allocation2 + $0x70] sm:$0xff] %vm3500, 0.0
  %3516 = vst.msk [vmem:[#allocation2 + $0x78] sm:$0xff] %vm3500, 0.0
  %3517 = vst.msk [vmem:[#allocation2 + $0x80] sm:$0xff] %vm3500, 0.0
  %3518 = vst.msk [vmem:[#allocation2 + $0x88] sm:$0xff] %vm3500, 0.0
  %3519 = vst.msk [vmem:[#allocation2 + $0x90] sm:$0xff] %vm3500, 0.0
  %3520 = vst.msk [vmem:[#allocation2 + $0x98] sm:$0xff] %vm3500, 0.0
  %3521 = vst.msk [vmem:[#allocation2 + $0xa0] sm:$0xff] %vm3500, 0.0
  %3522 = vst.msk [vmem:[#allocation2 + $0xa8] sm:$0xff] %vm3500, 0.0
  %3523 = vst.msk [vmem:[#allocation2 + $0xb0] sm:$0xff] %vm3500, 0.0
  %3524 = vst.msk [vmem:[#allocation2 + $0xb8] sm:$0xff] %vm3500, 0.0
  %3525 = vst.msk [vmem:[#allocation2 + $0xc0] sm:$0xff] %vm3500, 0.0
  %3526 = vst.msk [vmem:[#allocation2 + $0xc8] sm:$0xff] %vm3500, 0.0
  %3527 = vst.msk [vmem:[#allocation2 + $0xd0] sm:$0xff] %vm3500, 0.0
  %3528 = vst.msk [vmem:[#allocation2 + $0xd8] sm:$0xff] %vm3500, 0.0
  %3529 = vst.msk [vmem:[#allocation2 + $0xe0] sm:$0xff] %vm3500, 0.0
  %3530 = vst.msk [vmem:[#allocation2 + $0xe8] sm:$0xff] %vm3500, 0.0
  %3531 = vst.msk [vmem:[#allocation2 + $0xf0] sm:$0xff] %vm3500, 0.0
  %3532 = vst.msk [vmem:[#allocation2 + $0xf8] sm:$0xff] %vm3500, 0.0
  %3533 = vst.msk [vmem:[#allocation2 + $0x100] sm:$0xff] %vm3500, 0.0
  %3534 = vst.msk [vmem:[#allocation2 + $0x108] sm:$0xff] %vm3500, 0.0
  %3535 = vst.msk [vmem:[#allocation2 + $0x110] sm:$0xff] %vm3500, 0.0
  %3536 = vst.msk [vmem:[#allocation2 + $0x118] sm:$0xff] %vm3500, 0.0
  %3537 = vst.msk [vmem:[#allocation2 + $0x120] sm:$0xff] %vm3500, 0.0
  %3538 = vst.msk [vmem:[#allocation2 + $0x128] sm:$0xff] %vm3500, 0.0
  %3539 = vst.msk [vmem:[#allocation2 + $0x130] sm:$0xff] %vm3500, 0.0
  %3540 = vst.msk [vmem:[#allocation2 + $0x138] sm:$0xff] %vm3500, 0.0
  %3541 = vst.msk [vmem:[#allocation2 + $0x140] sm:$0xff] %vm3500, 0.0
  %3542 = vst.msk [vmem:[#allocation2 + $0x148] sm:$0xff] %vm3500, 0.0
  %3543 = vst.msk [vmem:[#allocation2 + $0x150] sm:$0xff] %vm3500, 0.0
  %3544 = vst.msk [vmem:[#allocation2 + $0x158] sm:$0xff] %vm3500, 0.0
  %3545 = vst.msk [vmem:[#allocation2 + $0x160] sm:$0xff] %vm3500, 0.0
  %3546 = vst.msk [vmem:[#allocation2 + $0x168] sm:$0xff] %vm3500, 0.0
  %3547 = vst.msk [vmem:[#allocation2 + $0x170] sm:$0xff] %vm3500, 0.0
  %3548 = vst.msk [vmem:[#allocation2 + $0x178] sm:$0xff] %vm3500, 0.0
  %3549 = vst.msk [vmem:[#allocation2 + $0x180] sm:$0xff] %vm3500, 0.0
  %3550 = vst.msk [vmem:[#allocation2 + $0x188] sm:$0xff] %vm3500, 0.0
  %3551 = vst.msk [vmem:[#allocation2 + $0x190] sm:$0xff] %vm3500, 0.0
  %3552 = vst.msk [vmem:[#allocation2 + $0x198] sm:$0xff] %vm3500, 0.0
  %3553 = vst.msk [vmem:[#allocation2 + $0x1a0] sm:$0xff] %vm3500, 0.0
  %3554 = vst.msk [vmem:[#allocation2 + $0x1a8] sm:$0xff] %vm3500, 0.0
  %3555 = vst.msk [vmem:[#allocation2 + $0x1b0] sm:$0xff] %vm3500, 0.0
  %3556 = vst.msk [vmem:[#allocation2 + $0x1b8] sm:$0xff] %vm3500, 0.0
  %3557 = vst.msk [vmem:[#allocation2 + $0x1c0] sm:$0xff] %vm3500, 0.0
  %3558 = vst.msk [vmem:[#allocation2 + $0x1c8] sm:$0xff] %vm3500, 0.0
  %3559 = vst.msk [vmem:[#allocation2 + $0x1d0] sm:$0xff] %vm3500, 0.0
  %3560 = vst.msk [vmem:[#allocation2 + $0x1d8] sm:$0xff] %vm3500, 0.0
  %3561 = vst.msk [vmem:[#allocation2 + $0x1e0] sm:$0xff] %vm3500, 0.0
  %3562 = vst.msk [vmem:[#allocation2 + $0x1e8] sm:$0xff] %vm3500, 0.0
  %3563 = vst.msk [vmem:[#allocation2 + $0x1f0] sm:$0xff] %vm3500, 0.0
  %3564 = vst.msk [vmem:[#allocation2 + $0x1f8] sm:$0xff] %vm3500, 0.0
  %3565 = vst.msk [vmem:[#allocation2 + $0x200] sm:$0xff] %vm3500, 0.0
  %3566 = vst.msk [vmem:[#allocation2] sm:$0xff] %vm3500, %v3436
  %3567 = vst.msk [vmem:[#allocation2 + $0x8] sm:$0xff] %vm3500, %v3437
  %3568 = vst.msk [vmem:[#allocation2 + $0x10] sm:$0xff] %vm3500, %v3438
  %3569 = vst.msk [vmem:[#allocation2 + $0x18] sm:$0xff] %vm3500, %v3439
  %3570 = vst.msk [vmem:[#allocation2 + $0x20] sm:$0xff] %vm3500, %v3440
  %3571 = vst.msk [vmem:[#allocation2 + $0x28] sm:$0xff] %vm3500, %v3441
  %3572 = vst.msk [vmem:[#allocation2 + $0x30] sm:$0xff] %vm3500, %v3442
  %3573 = vst.msk [vmem:[#allocation2 + $0x38] sm:$0xff] %vm3500, %v3443
  %3574 = vst.msk [vmem:[#allocation2 + $0x40] sm:$0xff] %vm3500, %v3444
  %3575 = vst.msk [vmem:[#allocation2 + $0x48] sm:$0xff] %vm3500, %v3445
  %3576 = vst.msk [vmem:[#allocation2 + $0x50] sm:$0xff] %vm3500, %v3446
  %3577 = vst.msk [vmem:[#allocation2 + $0x58] sm:$0xff] %vm3500, %v3447
  %3578 = vst.msk [vmem:[#allocation2 + $0x60] sm:$0xff] %vm3500, %v3448
  %3579 = vst.msk [vmem:[#allocation2 + $0x68] sm:$0xff] %vm3500, %v3449
  %3580 = vst.msk [vmem:[#allocation2 + $0x70] sm:$0xff] %vm3500, %v3450
  %3581 = vst.msk [vmem:[#allocation2 + $0x78] sm:$0xff] %vm3500, %v3451
  %3582 = vst.msk [vmem:[#allocation2 + $0x80] sm:$0xff] %vm3500, %v3452
  %3583 = vst.msk [vmem:[#allocation2 + $0x88] sm:$0xff] %vm3500, %v3453
  %3584 = vst.msk [vmem:[#allocation2 + $0x90] sm:$0xff] %vm3500, %v3454
  %3585 = vst.msk [vmem:[#allocation2 + $0x98] sm:$0xff] %vm3500, %v3455
  %3586 = vst.msk [vmem:[#allocation2 + $0xa0] sm:$0xff] %vm3500, %v3456
  %3587 = vst.msk [vmem:[#allocation2 + $0xa8] sm:$0xff] %vm3500, %v3457
  %3588 = vst.msk [vmem:[#allocation2 + $0xb0] sm:$0xff] %vm3500, %v3458
  %3589 = vst.msk [vmem:[#allocation2 + $0xb8] sm:$0xff] %vm3500, %v3459
  %3590 = vst.msk [vmem:[#allocation2 + $0xc0] sm:$0xff] %vm3500, %v3460
  %3591 = vst.msk [vmem:[#allocation2 + $0xc8] sm:$0xff] %vm3500, %v3461
  %3592 = vst.msk [vmem:[#allocation2 + $0xd0] sm:$0xff] %vm3500, %v3462
  %3593 = vst.msk [vmem:[#allocation2 + $0xd8] sm:$0xff] %vm3500, %v3463
  %3594 = vst.msk [vmem:[#allocation2 + $0xe0] sm:$0xff] %vm3500, %v3464
  %3595 = vst.msk [vmem:[#allocation2 + $0xe8] sm:$0xff] %vm3500, %v3465
  %3596 = vst.msk [vmem:[#allocation2 + $0xf0] sm:$0xff] %vm3500, %v3466
  %3597 = vst.msk [vmem:[#allocation2 + $0xf8] sm:$0xff] %vm3500, %v3467
  %3598 = vst.msk [vmem:[#allocation2 + $0x100] sm:$0xff] %vm3500, %v3468
  %3599 = vst.msk [vmem:[#allocation2 + $0x108] sm:$0xff] %vm3500, %v3469
  %3600 = vst.msk [vmem:[#allocation2 + $0x110] sm:$0xff] %vm3500, %v3470
  %3601 = vst.msk [vmem:[#allocation2 + $0x118] sm:$0xff] %vm3500, %v3471
  %3602 = vst.msk [vmem:[#allocation2 + $0x120] sm:$0xff] %vm3500, %v3472
  %3603 = vst.msk [vmem:[#allocation2 + $0x128] sm:$0xff] %vm3500, %v3473
  %3604 = vst.msk [vmem:[#allocation2 + $0x130] sm:$0xff] %vm3500, %v3474
  %3605 = vst.msk [vmem:[#allocation2 + $0x138] sm:$0xff] %vm3500, %v3475
  %3606 = vst.msk [vmem:[#allocation2 + $0x140] sm:$0xff] %vm3500, %v3476
  %3607 = vst.msk [vmem:[#allocation2 + $0x148] sm:$0xff] %vm3500, %v3477
  %3608 = vst.msk [vmem:[#allocation2 + $0x150] sm:$0xff] %vm3500, %v3478
  %3609 = vst.msk [vmem:[#allocation2 + $0x158] sm:$0xff] %vm3500, %v3479
  %3610 = vst.msk [vmem:[#allocation2 + $0x160] sm:$0xff] %vm3500, %v3480
  %3611 = vst.msk [vmem:[#allocation2 + $0x168] sm:$0xff] %vm3500, %v3481
  %3612 = vst.msk [vmem:[#allocation2 + $0x170] sm:$0xff] %vm3500, %v3482
  %3613 = vst.msk [vmem:[#allocation2 + $0x178] sm:$0xff] %vm3500, %v3483
  %3614 = vst.msk [vmem:[#allocation2 + $0x180] sm:$0xff] %vm3500, %v3484
  %3615 = vst.msk [vmem:[#allocation2 + $0x188] sm:$0xff] %vm3500, %v3485
  %3616 = vst.msk [vmem:[#allocation2 + $0x190] sm:$0xff] %vm3500, %v3486
  %3617 = vst.msk [vmem:[#allocation2 + $0x198] sm:$0xff] %vm3500, %v3487
  %3618 = vst.msk [vmem:[#allocation2 + $0x1a0] sm:$0xff] %vm3500, %v3488
  %3619 = vst.msk [vmem:[#allocation2 + $0x1a8] sm:$0xff] %vm3500, %v3489
  %3620 = vst.msk [vmem:[#allocation2 + $0x1b0] sm:$0xff] %vm3500, %v3490
  %3621 = vst.msk [vmem:[#allocation2 + $0x1b8] sm:$0xff] %vm3500, %v3491
  %3622 = vst.msk [vmem:[#allocation2 + $0x1c0] sm:$0xff] %vm3500, %v3492
  %3623 = vst.msk [vmem:[#allocation2 + $0x1c8] sm:$0xff] %vm3500, %v3493
  %3624 = vst.msk [vmem:[#allocation2 + $0x1d0] sm:$0xff] %vm3500, %v3494
  %3625 = vst.msk [vmem:[#allocation2 + $0x1d8] sm:$0xff] %vm3500, %v3495
  %3626 = vst.msk [vmem:[#allocation2 + $0x1e0] sm:$0xff] %vm3500, %v3496
  %3627 = vst.msk [vmem:[#allocation2 + $0x1e8] sm:$0xff] %vm3500, %v3497
  %3628 = vst.msk [vmem:[#allocation2 + $0x1f0] sm:$0xff] %vm3500, %v3498
  %3629 = vst.msk [vmem:[#allocation2 + $0x1f8] sm:$0xff] %vm3500, %v3499
  %v3630 = vld [vmem:[%s5] sm:$0x1]
  %v3631 = vld [vmem:[#allocation2] sm:$0xff]
  %v3632 = vld [vmem:[#allocation2 + $0x8] sm:$0xff]
  %v3633 = vld [vmem:[#allocation2 + $0x10] sm:$0xff]
  %v3634 = vld [vmem:[#allocation2 + $0x18] sm:$0xff]
  %v3635 = vld [vmem:[#allocation2 + $0x20] sm:$0xff]
  %v3636 = vld [vmem:[#allocation2 + $0x28] sm:$0xff]
  %v3637 = vld [vmem:[#allocation2 + $0x30] sm:$0xff]
  %v3638 = vld [vmem:[#allocation2 + $0x38] sm:$0xff]
  %v3639 = vld [vmem:[#allocation2 + $0x40] sm:$0xff]
  %v3640 = vld [vmem:[#allocation2 + $0x48] sm:$0xff]
  %v3641 = vld [vmem:[#allocation2 + $0x50] sm:$0xff]
  %v3642 = vld [vmem:[#allocation2 + $0x58] sm:$0xff]
  %v3643 = vld [vmem:[#allocation2 + $0x60] sm:$0xff]
  %v3644 = vld [vmem:[#allocation2 + $0x68] sm:$0xff]
  %v3645 = vld [vmem:[#allocation2 + $0x70] sm:$0xff]
  %v3646 = vld [vmem:[%s4] sm:$0xff]
  %v3647 = vld [vmem:[%s4 + $0x8] sm:$0xff]
  %v3648 = vld [vmem:[%s4 + $0x10] sm:$0xff]
  %v3649 = vld [vmem:[%s4 + $0x18] sm:$0xff]
  %v3650 = vld [vmem:[#allocation2 + $0x80] sm:$0xff]
  %v3651 = vld [vmem:[#allocation2 + $0x88] sm:$0xff]
  %v3652 = vld [vmem:[#allocation2 + $0x90] sm:$0xff]
  %v3653 = vld [vmem:[#allocation2 + $0x98] sm:$0xff]
  %v3654 = vld [vmem:[#allocation2 + $0xa0] sm:$0xff]
  %v3655 = vld [vmem:[#allocation2 + $0xa8] sm:$0xff]
  %v3656 = vld [vmem:[#allocation2 + $0xb0] sm:$0xff]
  %v3657 = vld [vmem:[#allocation2 + $0xb8] sm:$0xff]
  %v3658 = vld [vmem:[#allocation2 + $0xc0] sm:$0xff]
  %v3659 = vld [vmem:[#allocation2 + $0xc8] sm:$0xff]
  %v3660 = vld [vmem:[#allocation2 + $0xd0] sm:$0xff]
  %v3661 = vld [vmem:[#allocation2 + $0xd8] sm:$0xff]
  %v3662 = vld [vmem:[#allocation2 + $0xe0] sm:$0xff]
  %v3663 = vld [vmem:[#allocation2 + $0xe8] sm:$0xff]
  %v3664 = vld [vmem:[#allocation2 + $0xf0] sm:$0xff]
  %s3665 = scalar_lea.vmem %s4, 32
  %v3666 = vld [vmem:[%s3665] sm:$0xff]
  %v3667 = vld [vmem:[%s3665 + $0x8] sm:$0xff]
  %v3668 = vld [vmem:[%s3665 + $0x10] sm:$0xff]
  %v3669 = vld [vmem:[%s3665 + $0x18] sm:$0xff]
  %v3671 = vsel %vm3500, %v3650, 0
  %v3674 = vsel %vm3500, %v3651, 0
  %v3677 = vsel %vm3500, %v3652, 0
  %v3680 = vsel %vm3500, %v3653, 0
  %v3683 = vsel %vm3500, %v3654, 0
  %v3686 = vsel %vm3500, %v3655, 0
  %v3689 = vsel %vm3500, %v3656, 0
  %v3692 = vsel %vm3500, %v3657, 0
  %v3695 = vsel %vm3500, %v3658, 0
  %v3698 = vsel %vm3500, %v3659, 0
  %v3701 = vsel %vm3500, %v3660, 0
  %v3704 = vsel %vm3500, %v3661, 0
  %v3707 = vsel %vm3500, %v3662, 0
  %v3710 = vsel %vm3500, %v3663, 0
  %v3713 = vsel %vm3500, %v3664, 0
  %3715 = vmatprep.subr.mxu0 0.0
  %3716 = vmatpush1.msra.mxu0 %v3666
  %3717 = vmatprep.subr.mxu0 0.0
  %3718 = vmatpush1.msra.mxu0 %v3667
  %3719 = vmatprep.subr.mxu0 0.0
  %3720 = vmatpush1.msra.mxu0 %v3668
  %3721 = vmatprep.subr.mxu0 0.0
  %3722 = vmatpush1.msra.mxu0 %v3669
  %3723 = vmatprep.subr.mxu0 0.0
  %3724 = vmatpush1.msra.mxu0 0.0
  %3725 = vmatprep.subr.mxu0 0.0
  %3726 = vmatpush1.msra.mxu0 0.0
  %3727 = vmatprep.subr.mxu0 0.0
  %3728 = vmatpush1.msra.mxu0 0.0
  %3729 = vmatprep.subr.mxu0 0.0
  %3730 = vmatpush1.msra.mxu0 0.0
  %3731 = vmatprep.subr.mxu0 0.0
  %3732 = vmatpush1.msra.mxu0 0.0
  %3733 = vmatprep.subr.mxu0 0.0
  %3734 = vmatpush1.msra.mxu0 0.0
  %3735 = vmatprep.subr.mxu0 0.0
  %3736 = vmatpush1.msra.mxu0 0.0
  %3737 = vmatprep.subr.mxu0 0.0
  %3738 = vmatpush1.msra.mxu0 0.0
  %3739 = vmatprep.subr.mxu0 0.0
  %3740 = vmatpush1.msra.mxu0 0.0
  %3741 = vmatprep.subr.mxu0 0.0
  %3742 = vmatpush1.msra.mxu0 0.0
  %3743 = vmatprep.subr.mxu0 0.0
  %3744 = vmatpush1.msra.mxu0 0.0
  %3745 = vmatprep.subr.mxu0 0.0
  %3746 = vmatpush1.msra.mxu0 0.0
  %3747 = vmatprep.subr.mxu0 0.0
  %3748 = vmatpush1.msra.mxu0 0.0
  %3749 = vmatprep.subr.mxu0 0.0
  %3750 = vmatpush1.msra.mxu0 0.0
  %3751 = vmatprep.subr.mxu0 0.0
  %3752 = vmatpush1.msra.mxu0 0.0
  %3753 = vmatprep.subr.mxu0 0.0
  %3754 = vmatpush1.msra.mxu0 0.0
  %3755 = vmatprep.subr.mxu0 0.0
  %3756 = vmatpush1.msra.mxu0 0.0
  %3757 = vmatprep.subr.mxu0 0.0
  %3758 = vmatpush1.msra.mxu0 0.0
  %3759 = vmatprep.subr.mxu0 0.0
  %3760 = vmatpush1.msra.mxu0 0.0
  %3761 = vmatprep.subr.mxu0 0.0
  %3762 = vmatpush1.msra.mxu0 0.0
  %3763 = vmatprep.subr.mxu0 0.0
  %3764 = vmatpush1.msra.mxu0 0.0
  %3765 = vmatprep.subr.mxu0 0.0
  %3766 = vmatpush1.msra.mxu0 0.0
  %3767 = vmatprep.subr.mxu0 0.0
  %3768 = vmatpush1.msra.mxu0 0.0
  %3769 = vmatprep.subr.mxu0 0.0
  %3770 = vmatpush1.msra.mxu0 0.0
  %3771 = vmatprep.subr.mxu0 0.0
  %3772 = vmatpush1.msra.mxu0 0.0
  %3773 = vmatprep.subr.mxu0 0.0
  %3774 = vmatpush1.msra.mxu0 0.0
  %3775 = vmatprep.subr.mxu0 0.0
  %3776 = vmatpush1.msra.mxu0 0.0
  %3777 = vmatprep.subr.mxu0 0.0
  %3778 = vmatpush1.msra.mxu0 0.0
  %3779 = vmatprep.mubr.f32.mxu0 0.0
  %3780 = vmatmul.mubr.f32.gmra.mrb[0].mxu0 %v3671
  %v3781 = vpop.f32.mrb[0].mxu0
  %v3782 = vadd.f32 0.0, %v3781
  %v3783 = vpop.f32.mrb[0].mxu0
  %3784 = vmatprep.mubr.f32.mxu0 0.0
  %3785 = vmatmul.mubr.f32.gmra.mrb[0].mxu0 %v3674
  %v3786 = vpop.f32.mrb[0].mxu0
  %v3787 = vadd.f32 0.0, %v3786
  %v3788 = vpop.f32.mrb[0].mxu0
  %3789 = vmatprep.mubr.f32.mxu0 0.0
  %3790 = vmatmul.mubr.f32.gmra.mrb[0].mxu0 %v3677
  %v3791 = vpop.f32.mrb[0].mxu0
  %v3792 = vadd.f32 0.0, %v3791
  %v3793 = vpop.f32.mrb[0].mxu0
  %3794 = vmatprep.mubr.f32.mxu0 0.0
  %3795 = vmatmul.mubr.f32.gmra.mrb[0].mxu0 %v3680
  %v3796 = vpop.f32.mrb[0].mxu0
  %v3797 = vadd.f32 0.0, %v3796
  %v3798 = vpop.f32.mrb[0].mxu0
  %3799 = vmatprep.mubr.f32.mxu0 0.0
  %3800 = vmatmul.mubr.f32.gmra.mrb[0].mxu0 %v3683
  %v3801 = vpop.f32.mrb[0].mxu0
  %v3802 = vadd.f32 0.0, %v3801
  %v3803 = vpop.f32.mrb[0].mxu0
  %3804 = vmatprep.mubr.f32.mxu0 0.0
  %3805 = vmatmul.mubr.f32.gmra.mrb[0].mxu0 %v3686
  %v3806 = vpop.f32.mrb[0].mxu0
  %v3807 = vadd.f32 0.0, %v3806
  %v3808 = vpop.f32.mrb[0].mxu0
  %3809 = vmatprep.mubr.f32.mxu0 0.0
  %3810 = vmatmul.mubr.f32.gmra.mrb[0].mxu0 %v3689
  %v3811 = vpop.f32.mrb[0].mxu0
  %v3812 = vadd.f32 0.0, %v3811
  %v3813 = vpop.f32.mrb[0].mxu0
  %3814 = vmatprep.mubr.f32.mxu0 0.0
  %3815 = vmatmul.mubr.f32.gmra.mrb[0].mxu0 %v3692
  %v3816 = vpop.f32.mrb[0].mxu0
  %v3817 = vpop.f32.mrb[0].mxu0
  %3818 = vmatprep.mubr.f32.mxu0 0.0
  %3819 = vmatmul.mubr.f32.gmra.mrb[0].mxu0 %v3695
  %v3820 = vpop.f32.mrb[0].mxu0
  %v3821 = vadd.f32 0.0, %v3820
  %v3822 = vpop.f32.mrb[0].mxu0
  %3823 = vmatprep.mubr.f32.mxu0 0.0
  %3824 = vmatmul.mubr.f32.gmra.mrb[0].mxu0 %v3698
  %v3825 = vpop.f32.mrb[0].mxu0
  %v3826 = vadd.f32 0.0, %v3825
  %v3827 = vpop.f32.mrb[0].mxu0
  %3828 = vmatprep.mubr.f32.mxu0 0.0
  %3829 = vmatmul.mubr.f32.gmra.mrb[0].mxu0 %v3701
  %v3830 = vpop.f32.mrb[0].mxu0
  %v3831 = vadd.f32 0.0, %v3830
  %v3832 = vpop.f32.mrb[0].mxu0
  %3833 = vmatprep.mubr.f32.mxu0 0.0
  %3834 = vmatmul.mubr.f32.gmra.mrb[0].mxu0 %v3704
  %v3835 = vpop.f32.mrb[0].mxu0
  %v3836 = vadd.f32 0.0, %v3835
  %v3837 = vpop.f32.mrb[0].mxu0
  %3838 = vmatprep.mubr.f32.mxu0 0.0
  %3839 = vmatmul.mubr.f32.gmra.mrb[0].mxu0 %v3707
  %v3840 = vpop.f32.mrb[0].mxu0
  %v3841 = vadd.f32 0.0, %v3840
  %v3842 = vpop.f32.mrb[0].mxu0
  %3843 = vmatprep.mubr.f32.mxu0 0.0
  %3844 = vmatmul.mubr.f32.gmra.mrb[0].mxu0 %v3710
  %v3845 = vpop.f32.mrb[0].mxu0
  %v3846 = vadd.f32 0.0, %v3845
  %v3847 = vpop.f32.mrb[0].mxu0
  %3848 = vmatprep.mubr.f32.mxu0 0.0
  %3849 = vmatmul.mubr.f32.gmra.mrb[0].mxu0 %v3713
  %v3850 = vpop.f32.mrb[0].mxu0
  %v3851 = vadd.f32 0.0, %v3850
  %v3852 = vpop.f32.mrb[0].mxu0
  %3853 = vdwg.mxu0
  %v3855 = vsel %vm3500, %v3631, 0
  %v3858 = vsel %vm3500, %v3632, 0
  %v3861 = vsel %vm3500, %v3633, 0
  %v3864 = vsel %vm3500, %v3634, 0
  %v3867 = vsel %vm3500, %v3635, 0
  %v3870 = vsel %vm3500, %v3636, 0
  %v3873 = vsel %vm3500, %v3637, 0
  %v3876 = vsel %vm3500, %v3638, 0
  %v3879 = vsel %vm3500, %v3639, 0
  %v3882 = vsel %vm3500, %v3640, 0
  %v3885 = vsel %vm3500, %v3641, 0
  %v3888 = vsel %vm3500, %v3642, 0
  %v3891 = vsel %vm3500, %v3643, 0
  %v3894 = vsel %vm3500, %v3644, 0
  %v3897 = vsel %vm3500, %v3645, 0
  %3899 = vmatprep.subr.mxu0 0.0
  %3900 = vmatpush1.msra.mxu0 %v3646
  %3901 = vmatprep.subr.mxu0 0.0
  %3902 = vmatpush1.msra.mxu0 %v3647
  %3903 = vmatprep.subr.mxu0 0.0
  %3904 = vmatpush1.msra.mxu0 %v3648
  %3905 = vmatprep.subr.mxu0 0.0
  %3906 = vmatpush1.msra.mxu0 %v3649
  %3907 = vmatprep.subr.mxu0 0.0
  %3908 = vmatpush1.msra.mxu0 0.0
  %3909 = vmatprep.subr.mxu0 0.0
  %3910 = vmatpush1.msra.mxu0 0.0
  %3911 = vmatprep.subr.mxu0 0.0
  %3912 = vmatpush1.msra.mxu0 0.0
  %3913 = vmatprep.subr.mxu0 0.0
  %3914 = vmatpush1.msra.mxu0 0.0
  %3915 = vmatprep.subr.mxu0 0.0
  %3916 = vmatpush1.msra.mxu0 0.0
  %3917 = vmatprep.subr.mxu0 0.0
  %3918 = vmatpush1.msra.mxu0 0.0
  %3919 = vmatprep.subr.mxu0 0.0
  %3920 = vmatpush1.msra.mxu0 0.0
  %3921 = vmatprep.subr.mxu0 0.0
  %3922 = vmatpush1.msra.mxu0 0.0
  %3923 = vmatprep.subr.mxu0 0.0
  %3924 = vmatpush1.msra.mxu0 0.0
  %3925 = vmatprep.subr.mxu0 0.0
  %3926 = vmatpush1.msra.mxu0 0.0
  %3927 = vmatprep.subr.mxu0 0.0
  %3928 = vmatpush1.msra.mxu0 0.0
  %3929 = vmatprep.subr.mxu0 0.0
  %3930 = vmatpush1.msra.mxu0 0.0
  %3931 = vmatprep.subr.mxu0 0.0
  %3932 = vmatpush1.msra.mxu0 0.0
  %3933 = vmatprep.subr.mxu0 0.0
  %3934 = vmatpush1.msra.mxu0 0.0
  %3935 = vmatprep.subr.mxu0 0.0
  %3936 = vmatpush1.msra.mxu0 0.0
  %3937 = vmatprep.subr.mxu0 0.0
  %3938 = vmatpush1.msra.mxu0 0.0
  %3939 = vmatprep.subr.mxu0 0.0
  %3940 = vmatpush1.msra.mxu0 0.0
  %3941 = vmatprep.subr.mxu0 0.0
  %3942 = vmatpush1.msra.mxu0 0.0
  %3943 = vmatprep.subr.mxu0 0.0
  %3944 = vmatpush1.msra.mxu0 0.0
  %3945 = vmatprep.subr.mxu0 0.0
  %3946 = vmatpush1.msra.mxu0 0.0
  %3947 = vmatprep.subr.mxu0 0.0
  %3948 = vmatpush1.msra.mxu0 0.0
  %3949 = vmatprep.subr.mxu0 0.0
  %3950 = vmatpush1.msra.mxu0 0.0
  %3951 = vmatprep.subr.mxu0 0.0
  %3952 = vmatpush1.msra.mxu0 0.0
  %3953 = vmatprep.subr.mxu0 0.0
  %3954 = vmatpush1.msra.mxu0 0.0
  %3955 = vmatprep.subr.mxu0 0.0
  %3956 = vmatpush1.msra.mxu0 0.0
  %3957 = vmatprep.subr.mxu0 0.0
  %3958 = vmatpush1.msra.mxu0 0.0
  %3959 = vmatprep.subr.mxu0 0.0
  %3960 = vmatpush1.msra.mxu0 0.0
  %3961 = vmatprep.subr.mxu0 0.0
  %3962 = vmatpush1.msra.mxu0 0.0
  %3963 = vmatprep.mubr.f32.mxu0 0.0
  %3964 = vmatmul.mubr.f32.gmra.mrb[0].mxu0 %v3855
  %v3965 = vpop.f32.mrb[0].mxu0
  %v3966 = vadd.f32 %v3782, %v3965
  %v3967 = vpop.f32.mrb[0].mxu0
  %3968 = vmatprep.mubr.f32.mxu0 0.0
  %3969 = vmatmul.mubr.f32.gmra.mrb[0].mxu0 %v3858
  %v3970 = vpop.f32.mrb[0].mxu0
  %v3971 = vadd.f32 %v3787, %v3970
  %v3972 = vpop.f32.mrb[0].mxu0
  %3973 = vmatprep.mubr.f32.mxu0 0.0
  %3974 = vmatmul.mubr.f32.gmra.mrb[0].mxu0 %v3861
  %v3975 = vpop.f32.mrb[0].mxu0
  %v3976 = vadd.f32 %v3792, %v3975
  %v3977 = vpop.f32.mrb[0].mxu0
  %3978 = vmatprep.mubr.f32.mxu0 0.0
  %3979 = vmatmul.mubr.f32.gmra.mrb[0].mxu0 %v3864
  %v3980 = vpop.f32.mrb[0].mxu0
  %v3981 = vadd.f32 %v3797, %v3980
  %v3982 = vpop.f32.mrb[0].mxu0
  %3983 = vmatprep.mubr.f32.mxu0 0.0
  %3984 = vmatmul.mubr.f32.gmra.mrb[0].mxu0 %v3867
  %v3985 = vpop.f32.mrb[0].mxu0
  %v3986 = vadd.f32 %v3802, %v3985
  %v3987 = vpop.f32.mrb[0].mxu0
  %3988 = vmatprep.mubr.f32.mxu0 0.0
  %3989 = vmatmul.mubr.f32.gmra.mrb[0].mxu0 %v3870
  %v3990 = vpop.f32.mrb[0].mxu0
  %v3991 = vadd.f32 %v3807, %v3990
  %v3992 = vpop.f32.mrb[0].mxu0
  %3993 = vmatprep.mubr.f32.mxu0 0.0
  %3994 = vmatmul.mubr.f32.gmra.mrb[0].mxu0 %v3873
  %v3995 = vpop.f32.mrb[0].mxu0
  %v3996 = vadd.f32 %v3812, %v3995
  %v3997 = vpop.f32.mrb[0].mxu0
  %3998 = vmatprep.mubr.f32.mxu0 0.0
  %3999 = vmatmul.mubr.f32.gmra.mrb[0].mxu0 %v3876
  %v4000 = vpop.f32.mrb[0].mxu0
  %v4001 = vpop.f32.mrb[0].mxu0
  %4002 = vmatprep.mubr.f32.mxu0 0.0
  %4003 = vmatmul.mubr.f32.gmra.mrb[0].mxu0 %v3879
  %v4004 = vpop.f32.mrb[0].mxu0
  %v4005 = vadd.f32 %v3821, %v4004
  %v4006 = vpop.f32.mrb[0].mxu0
  %4007 = vmatprep.mubr.f32.mxu0 0.0
  %4008 = vmatmul.mubr.f32.gmra.mrb[0].mxu0 %v3882
  %v4009 = vpop.f32.mrb[0].mxu0
  %v4010 = vadd.f32 %v3826, %v4009
  %v4011 = vpop.f32.mrb[0].mxu0
  %4012 = vmatprep.mubr.f32.mxu0 0.0
  %4013 = vmatmul.mubr.f32.gmra.mrb[0].mxu0 %v3885
  %v4014 = vpop.f32.mrb[0].mxu0
  %v4015 = vadd.f32 %v3831, %v4014
  %v4016 = vpop.f32.mrb[0].mxu0
  %4017 = vmatprep.mubr.f32.mxu0 0.0
  %4018 = vmatmul.mubr.f32.gmra.mrb[0].mxu0 %v3888
  %v4019 = vpop.f32.mrb[0].mxu0
  %v4020 = vadd.f32 %v3836, %v4019
  %v4021 = vpop.f32.mrb[0].mxu0
  %4022 = vmatprep.mubr.f32.mxu0 0.0
  %4023 = vmatmul.mubr.f32.gmra.mrb[0].mxu0 %v3891
  %v4024 = vpop.f32.mrb[0].mxu0
  %v4025 = vadd.f32 %v3841, %v4024
  %v4026 = vpop.f32.mrb[0].mxu0
  %4027 = vmatprep.mubr.f32.mxu0 0.0
  %4028 = vmatmul.mubr.f32.gmra.mrb[0].mxu0 %v3894
  %v4029 = vpop.f32.mrb[0].mxu0
  %v4030 = vadd.f32 %v3846, %v4029
  %v4031 = vpop.f32.mrb[0].mxu0
  %4032 = vmatprep.mubr.f32.mxu0 0.0
  %4033 = vmatmul.mubr.f32.gmra.mrb[0].mxu0 %v3897
  %v4034 = vpop.f32.mrb[0].mxu0
  %v4035 = vadd.f32 %v3851, %v4034
  %v4036 = vpop.f32.mrb[0].mxu0
  %4037 = vdwg.mxu0
  %v4038 = vld [vmem:[#allocation2 + $0x1] sm:$0xff]
  %v4039 = vld [vmem:[#allocation2 + $0x9] sm:$0xff]
  %v4040 = vld [vmem:[#allocation2 + $0x11] sm:$0xff]
  %v4041 = vld [vmem:[#allocation2 + $0x19] sm:$0xff]
  %v4042 = vld [vmem:[#allocation2 + $0x21] sm:$0xff]
  %v4043 = vld [vmem:[#allocation2 + $0x29] sm:$0xff]
  %v4044 = vld [vmem:[#allocation2 + $0x31] sm:$0xff]
  %v4045 = vld [vmem:[#allocation2 + $0x39] sm:$0xff]
  %v4046 = vld [vmem:[#allocation2 + $0x41] sm:$0xff]
  %v4047 = vld [vmem:[#allocation2 + $0x49] sm:$0xff]
  %v4048 = vld [vmem:[#allocation2 + $0x51] sm:$0xff]
  %v4049 = vld [vmem:[#allocation2 + $0x59] sm:$0xff]
  %v4050 = vld [vmem:[#allocation2 + $0x61] sm:$0xff]
  %v4051 = vld [vmem:[#allocation2 + $0x69] sm:$0xff]
  %v4052 = vld [vmem:[#allocation2 + $0x71] sm:$0xff]
  %s4053 = scalar_lea.vmem %s4, 64
  %v4054 = vld [vmem:[%s4053] sm:$0xff]
  %v4055 = vld [vmem:[%s4053 + $0x8] sm:$0xff]
  %v4056 = vld [vmem:[%s4053 + $0x10] sm:$0xff]
  %v4057 = vld [vmem:[%s4053 + $0x18] sm:$0xff]
  %v4059 = vsel %vm3500, %v4038, 0
  %v4062 = vsel %vm3500, %v4039, 0
  %v4065 = vsel %vm3500, %v4040, 0
  %v4068 = vsel %vm3500, %v4041, 0
  %v4071 = vsel %vm3500, %v4042, 0
  %v4074 = vsel %vm3500, %v4043, 0
  %v4077 = vsel %vm3500, %v4044, 0
  %v4080 = vsel %vm3500, %v4045, 0
  %v4083 = vsel %vm3500, %v4046, 0
  %v4086 = vsel %vm3500, %v4047, 0
  %v4089 = vsel %vm3500, %v4048, 0
  %v4092 = vsel %vm3500, %v4049, 0
  %v4095 = vsel %vm3500, %v4050, 0
  %v4098 = vsel %vm3500, %v4051, 0
  %v4101 = vsel %vm3500, %v4052, 0
  %4103 = vmatprep.subr.mxu0 0.0
  %4104 = vmatpush1.msra.mxu0 %v4054
  %4105 = vmatprep.subr.mxu0 0.0
  %4106 = vmatpush1.msra.mxu0 %v4055
  %4107 = vmatprep.subr.mxu0 0.0
  %4108 = vmatpush1.msra.mxu0 %v4056
  %4109 = vmatprep.subr.mxu0 0.0
  %4110 = vmatpush1.msra.mxu0 %v4057
  %4111 = vmatprep.subr.mxu0 0.0
  %4112 = vmatpush1.msra.mxu0 0.0
  %4113 = vmatprep.subr.mxu0 0.0
  %4114 = vmatpush1.msra.mxu0 0.0
  %4115 = vmatprep.subr.mxu0 0.0
  %4116 = vmatpush1.msra.mxu0 0.0
  %4117 = vmatprep.subr.mxu0 0.0
  %4118 = vmatpush1.msra.mxu0 0.0
  %4119 = vmatprep.subr.mxu0 0.0
  %4120 = vmatpush1.msra.mxu0 0.0
  %4121 = vmatprep.subr.mxu0 0.0
  %4122 = vmatpush1.msra.mxu0 0.0
  %4123 = vmatprep.subr.mxu0 0.0
  %4124 = vmatpush1.msra.mxu0 0.0
  %4125 = vmatprep.subr.mxu0 0.0
  %4126 = vmatpush1.msra.mxu0 0.0
  %4127 = vmatprep.subr.mxu0 0.0
  %4128 = vmatpush1.msra.mxu0 0.0
  %4129 = vmatprep.subr.mxu0 0.0
  %4130 = vmatpush1.msra.mxu0 0.0
  %4131 = vmatprep.subr.mxu0 0.0
  %4132 = vmatpush1.msra.mxu0 0.0
  %4133 = vmatprep.subr.mxu0 0.0
  %4134 = vmatpush1.msra.mxu0 0.0
  %4135 = vmatprep.subr.mxu0 0.0
  %4136 = vmatpush1.msra.mxu0 0.0
  %4137 = vmatprep.subr.mxu0 0.0
  %4138 = vmatpush1.msra.mxu0 0.0
  %4139 = vmatprep.subr.mxu0 0.0
  %4140 = vmatpush1.msra.mxu0 0.0
  %4141 = vmatprep.subr.mxu0 0.0
  %4142 = vmatpush1.msra.mxu0 0.0
  %4143 = vmatprep.subr.mxu0 0.0
  %4144 = vmatpush1.msra.mxu0 0.0
  %4145 = vmatprep.subr.mxu0 0.0
  %4146 = vmatpush1.msra.mxu0 0.0
  %4147 = vmatprep.subr.mxu0 0.0
  %4148 = vmatpush1.msra.mxu0 0.0
  %4149 = vmatprep.subr.mxu0 0.0
  %4150 = vmatpush1.msra.mxu0 0.0
  %4151 = vmatprep.subr.mxu0 0.0
  %4152 = vmatpush1.msra.mxu0 0.0
  %4153 = vmatprep.subr.mxu0 0.0
  %4154 = vmatpush1.msra.mxu0 0.0
  %4155 = vmatprep.subr.mxu0 0.0
  %4156 = vmatpush1.msra.mxu0 0.0
  %4157 = vmatprep.subr.mxu0 0.0
  %4158 = vmatpush1.msra.mxu0 0.0
  %4159 = vmatprep.subr.mxu0 0.0
  %4160 = vmatpush1.msra.mxu0 0.0
  %4161 = vmatprep.subr.mxu0 0.0
  %4162 = vmatpush1.msra.mxu0 0.0
  %4163 = vmatprep.subr.mxu0 0.0
  %4164 = vmatpush1.msra.mxu0 0.0
  %4165 = vmatprep.subr.mxu0 0.0
  %4166 = vmatpush1.msra.mxu0 0.0
  %4167 = vmatprep.mubr.f32.mxu0 0.0
  %4168 = vmatmul.mubr.f32.gmra.mrb[0].mxu0 %v4059
  %v4169 = vpop.f32.mrb[0].mxu0
  %v4170 = vadd.f32 0.0, %v4169
  %v4171 = vpop.f32.mrb[0].mxu0
  %4172 = vmatprep.mubr.f32.mxu0 0.0
  %4173 = vmatmul.mubr.f32.gmra.mrb[0].mxu0 %v4062
  %v4174 = vpop.f32.mrb[0].mxu0
  %v4175 = vadd.f32 0.0, %v4174
  %v4176 = vpop.f32.mrb[0].mxu0
  %4177 = vmatprep.mubr.f32.mxu0 0.0
  %4178 = vmatmul.mubr.f32.gmra.mrb[0].mxu0 %v4065
  %v4179 = vpop.f32.mrb[0].mxu0
  %v4180 = vadd.f32 0.0, %v4179
  %v4181 = vpop.f32.mrb[0].mxu0
  %4182 = vmatprep.mubr.f32.mxu0 0.0
  %4183 = vmatmul.mubr.f32.gmra.mrb[0].mxu0 %v4068
  %v4184 = vpop.f32.mrb[0].mxu0
  %v4185 = vadd.f32 0.0, %v4184
  %v4186 = vpop.f32.mrb[0].mxu0
  %4187 = vmatprep.mubr.f32.mxu0 0.0
  %4188 = vmatmul.mubr.f32.gmra.mrb[0].mxu0 %v4071
  %v4189 = vpop.f32.mrb[0].mxu0
  %v4190 = vadd.f32 0.0, %v4189
  %v4191 = vpop.f32.mrb[0].mxu0
  %4192 = vmatprep.mubr.f32.mxu0 0.0
  %4193 = vmatmul.mubr.f32.gmra.mrb[0].mxu0 %v4074
  %v4194 = vpop.f32.mrb[0].mxu0
  %v4195 = vadd.f32 0.0, %v4194
  %v4196 = vpop.f32.mrb[0].mxu0
  %4197 = vmatprep.mubr.f32.mxu0 0.0
  %4198 = vmatmul.mubr.f32.gmra.mrb[0].mxu0 %v4077
  %v4199 = vpop.f32.mrb[0].mxu0
  %v4200 = vadd.f32 0.0, %v4199
  %v4201 = vpop.f32.mrb[0].mxu0
  %4202 = vmatprep.mubr.f32.mxu0 0.0
  %4203 = vmatmul.mubr.f32.gmra.mrb[0].mxu0 %v4080
  %v4204 = vpop.f32.mrb[0].mxu0
  %v4205 = vpop.f32.mrb[0].mxu0
  %4206 = vmatprep.mubr.f32.mxu0 0.0
  %4207 = vmatmul.mubr.f32.gmra.mrb[0].mxu0 %v4083
  %v4208 = vpop.f32.mrb[0].mxu0
  %v4209 = vadd.f32 0.0, %v4208
  %v4210 = vpop.f32.mrb[0].mxu0
  %4211 = vmatprep.mubr.f32.mxu0 0.0
  %4212 = vmatmul.mubr.f32.gmra.mrb[0].mxu0 %v4086
  %v4213 = vpop.f32.mrb[0].mxu0
  %v4214 = vadd.f32 0.0, %v4213
  %v4215 = vpop.f32.mrb[0].mxu0
  %4216 = vmatprep.mubr.f32.mxu0 0.0
  %4217 = vmatmul.mubr.f32.gmra.mrb[0].mxu0 %v4089
  %v4218 = vpop.f32.mrb[0].mxu0
  %v4219 = vadd.f32 0.0, %v4218
  %v4220 = vpop.f32.mrb[0].mxu0
  %4221 = vmatprep.mubr.f32.mxu0 0.0
  %4222 = vmatmul.mubr.f32.gmra.mrb[0].mxu0 %v4092
  %v4223 = vpop.f32.mrb[0].mxu0
  %v4224 = vadd.f32 0.0, %v4223
  %v4225 = vpop.f32.mrb[0].mxu0
  %4226 = vmatprep.mubr.f32.mxu0 0.0
  %4227 = vmatmul.mubr.f32.gmra.mrb[0].mxu0 %v4095
  %v4228 = vpop.f32.mrb[0].mxu0
  %v4229 = vadd.f32 0.0, %v4228
  %v4230 = vpop.f32.mrb[0].mxu0
  %4231 = vmatprep.mubr.f32.mxu0 0.0
  %4232 = vmatmul.mubr.f32.gmra.mrb[0].mxu0 %v4098
  %v4233 = vpop.f32.mrb[0].mxu0
  %v4234 = vadd.f32 0.0, %v4233
  %v4235 = vpop.f32.mrb[0].mxu0
  %4236 = vmatprep.mubr.f32.mxu0 0.0
  %4237 = vmatmul.mubr.f32.gmra.mrb[0].mxu0 %v4101
  %v4238 = vpop.f32.mrb[0].mxu0
  %v4239 = vadd.f32 0.0, %v4238
  %v4240 = vpop.f32.mrb[0].mxu0
  %4241 = vdwg.mxu0
  %v4242 = vadd.f32 %v3966, %v4170
  %v4243 = vadd.f32 %v3971, %v4175
  %v4244 = vadd.f32 %v3976, %v4180
  %v4245 = vadd.f32 %v3981, %v4185
  %v4246 = vadd.f32 %v3986, %v4190
  %v4247 = vadd.f32 %v3991, %v4195
  %v4248 = vadd.f32 %v3996, %v4200
  %v4249 = vadd.f32 %v4005, %v4209
  %v4250 = vadd.f32 %v4010, %v4214
  %v4251 = vadd.f32 %v4015, %v4219
  %v4252 = vadd.f32 %v4020, %v4224
  %v4253 = vadd.f32 %v4025, %v4229
  %v4254 = vadd.f32 %v4030, %v4234
  %v4255 = vadd.f32 %v4035, %v4239
  %v4256 = vld [vmem:[#allocation2 + $0x100] sm:$0xff]
  %v4257 = vld [vmem:[#allocation2 + $0x108] sm:$0xff]
  %v4258 = vld [vmem:[#allocation2 + $0x110] sm:$0xff]
  %v4259 = vld [vmem:[#allocation2 + $0x118] sm:$0xff]
  %v4260 = vld [vmem:[#allocation2 + $0x120] sm:$0xff]
  %v4261 = vld [vmem:[#allocation2 + $0x128] sm:$0xff]
  %v4262 = vld [vmem:[#allocation2 + $0x130] sm:$0xff]
  %v4263 = vld [vmem:[#allocation2 + $0x138] sm:$0xff]
  %v4264 = vld [vmem:[#allocation2 + $0x140] sm:$0xff]
  %v4265 = vld [vmem:[#allocation2 + $0x148] sm:$0xff]
  %v4266 = vld [vmem:[#allocation2 + $0x150] sm:$0xff]
  %v4267 = vld [vmem:[#allocation2 + $0x158] sm:$0xff]
  %v4268 = vld [vmem:[#allocation2 + $0x160] sm:$0xff]
  %v4269 = vld [vmem:[#allocation2 + $0x168] sm:$0xff]
  %v4270 = vld [vmem:[#allocation2 + $0x170] sm:$0xff]
  %s4271 = scalar_lea.vmem %s4, 96
  %v4272 = vld [vmem:[%s4271] sm:$0xff]
  %v4273 = vld [vmem:[%s4271 + $0x8] sm:$0xff]
  %v4274 = vld [vmem:[%s4271 + $0x10] sm:$0xff]
  %v4275 = vld [vmem:[%s4271 + $0x18] sm:$0xff]
  %v4277 = vsel %vm3500, %v4256, 0
  %v4280 = vsel %vm3500, %v4257, 0
  %v4283 = vsel %vm3500, %v4258, 0
  %v4286 = vsel %vm3500, %v4259, 0
  %v4289 = vsel %vm3500, %v4260, 0
  %v4292 = vsel %vm3500, %v4261, 0
  %v4295 = vsel %vm3500, %v4262, 0
  %v4298 = vsel %vm3500, %v4263, 0
  %v4301 = vsel %vm3500, %v4264, 0
  %v4304 = vsel %vm3500, %v4265, 0
  %v4307 = vsel %vm3500, %v4266, 0
  %v4310 = vsel %vm3500, %v4267, 0
  %v4313 = vsel %vm3500, %v4268, 0
  %v4316 = vsel %vm3500, %v4269, 0
  %v4319 = vsel %vm3500, %v4270, 0
  %4321 = vmatprep.subr.mxu0 0.0
  %4322 = vmatpush1.msra.mxu0 %v4272
  %4323 = vmatprep.subr.mxu0 0.0
  %4324 = vmatpush1.msra.mxu0 %v4273
  %4325 = vmatprep.subr.mxu0 0.0
  %4326 = vmatpush1.msra.mxu0 %v4274
  %4327 = vmatprep.subr.mxu0 0.0
  %4328 = vmatpush1.msra.mxu0 %v4275
  %4329 = vmatprep.subr.mxu0 0.0
  %4330 = vmatpush1.msra.mxu0 0.0
  %4331 = vmatprep.subr.mxu0 0.0
  %4332 = vmatpush1.msra.mxu0 0.0
  %4333 = vmatprep.subr.mxu0 0.0
  %4334 = vmatpush1.msra.mxu0 0.0
  %4335 = vmatprep.subr.mxu0 0.0
  %4336 = vmatpush1.msra.mxu0 0.0
  %4337 = vmatprep.subr.mxu0 0.0
  %4338 = vmatpush1.msra.mxu0 0.0
  %4339 = vmatprep.subr.mxu0 0.0
  %4340 = vmatpush1.msra.mxu0 0.0
  %4341 = vmatprep.subr.mxu0 0.0
  %4342 = vmatpush1.msra.mxu0 0.0
  %4343 = vmatprep.subr.mxu0 0.0
  %4344 = vmatpush1.msra.mxu0 0.0
  %4345 = vmatprep.subr.mxu0 0.0
  %4346 = vmatpush1.msra.mxu0 0.0
  %4347 = vmatprep.subr.mxu0 0.0
  %4348 = vmatpush1.msra.mxu0 0.0
  %4349 = vmatprep.subr.mxu0 0.0
  %4350 = vmatpush1.msra.mxu0 0.0
  %4351 = vmatprep.subr.mxu0 0.0
  %4352 = vmatpush1.msra.mxu0 0.0
  %4353 = vmatprep.subr.mxu0 0.0
  %4354 = vmatpush1.msra.mxu0 0.0
  %4355 = vmatprep.subr.mxu0 0.0
  %4356 = vmatpush1.msra.mxu0 0.0
  %4357 = vmatprep.subr.mxu0 0.0
  %4358 = vmatpush1.msra.mxu0 0.0
  %4359 = vmatprep.subr.mxu0 0.0
  %4360 = vmatpush1.msra.mxu0 0.0
  %4361 = vmatprep.subr.mxu0 0.0
  %4362 = vmatpush1.msra.mxu0 0.0
  %4363 = vmatprep.subr.mxu0 0.0
  %4364 = vmatpush1.msra.mxu0 0.0
  %4365 = vmatprep.subr.mxu0 0.0
  %4366 = vmatpush1.msra.mxu0 0.0
  %4367 = vmatprep.subr.mxu0 0.0
  %4368 = vmatpush1.msra.mxu0 0.0
  %4369 = vmatprep.subr.mxu0 0.0
  %4370 = vmatpush1.msra.mxu0 0.0
  %4371 = vmatprep.subr.mxu0 0.0
  %4372 = vmatpush1.msra.mxu0 0.0
  %4373 = vmatprep.subr.mxu0 0.0
  %4374 = vmatpush1.msra.mxu0 0.0
  %4375 = vmatprep.subr.mxu0 0.0
  %4376 = vmatpush1.msra.mxu0 0.0
  %4377 = vmatprep.subr.mxu0 0.0
  %4378 = vmatpush1.msra.mxu0 0.0
  %4379 = vmatprep.subr.mxu0 0.0
  %4380 = vmatpush1.msra.mxu0 0.0
  %4381 = vmatprep.subr.mxu0 0.0
  %4382 = vmatpush1.msra.mxu0 0.0
  %4383 = vmatprep.subr.mxu0 0.0
  %4384 = vmatpush1.msra.mxu0 0.0
  %4385 = vmatprep.mubr.f32.mxu0 0.0
  %4386 = vmatmul.mubr.f32.gmra.mrb[0].mxu0 %v4277
  %v4387 = vpop.f32.mrb[0].mxu0
  %v4388 = vadd.f32 0.0, %v4387
  %v4389 = vpop.f32.mrb[0].mxu0
  %4390 = vmatprep.mubr.f32.mxu0 0.0
  %4391 = vmatmul.mubr.f32.gmra.mrb[0].mxu0 %v4280
  %v4392 = vpop.f32.mrb[0].mxu0
  %v4393 = vadd.f32 0.0, %v4392
  %v4394 = vpop.f32.mrb[0].mxu0
  %4395 = vmatprep.mubr.f32.mxu0 0.0
  %4396 = vmatmul.mubr.f32.gmra.mrb[0].mxu0 %v4283
  %v4397 = vpop.f32.mrb[0].mxu0
  %v4398 = vadd.f32 0.0, %v4397
  %v4399 = vpop.f32.mrb[0].mxu0
  %4400 = vmatprep.mubr.f32.mxu0 0.0
  %4401 = vmatmul.mubr.f32.gmra.mrb[0].mxu0 %v4286
  %v4402 = vpop.f32.mrb[0].mxu0
  %v4403 = vadd.f32 0.0, %v4402
  %v4404 = vpop.f32.mrb[0].mxu0
  %4405 = vmatprep.mubr.f32.mxu0 0.0
  %4406 = vmatmul.mubr.f32.gmra.mrb[0].mxu0 %v4289
  %v4407 = vpop.f32.mrb[0].mxu0
  %v4408 = vadd.f32 0.0, %v4407
  %v4409 = vpop.f32.mrb[0].mxu0
  %4410 = vmatprep.mubr.f32.mxu0 0.0
  %4411 = vmatmul.mubr.f32.gmra.mrb[0].mxu0 %v4292
  %v4412 = vpop.f32.mrb[0].mxu0
  %v4413 = vadd.f32 0.0, %v4412
  %v4414 = vpop.f32.mrb[0].mxu0
  %4415 = vmatprep.mubr.f32.mxu0 0.0
  %4416 = vmatmul.mubr.f32.gmra.mrb[0].mxu0 %v4295
  %v4417 = vpop.f32.mrb[0].mxu0
  %v4418 = vadd.f32 0.0, %v4417
  %v4419 = vpop.f32.mrb[0].mxu0
  %4420 = vmatprep.mubr.f32.mxu0 0.0
  %4421 = vmatmul.mubr.f32.gmra.mrb[0].mxu0 %v4298
  %v4422 = vpop.f32.mrb[0].mxu0
  %v4423 = vpop.f32.mrb[0].mxu0
  %4424 = vmatprep.mubr.f32.mxu0 0.0
  %4425 = vmatmul.mubr.f32.gmra.mrb[0].mxu0 %v4301
  %v4426 = vpop.f32.mrb[0].mxu0
  %v4427 = vadd.f32 0.0, %v4426
  %v4428 = vpop.f32.mrb[0].mxu0
  %4429 = vmatprep.mubr.f32.mxu0 0.0
  %4430 = vmatmul.mubr.f32.gmra.mrb[0].mxu0 %v4304
  %v4431 = vpop.f32.mrb[0].mxu0
  %v4432 = vadd.f32 0.0, %v4431
  %v4433 = vpop.f32.mrb[0].mxu0
  %4434 = vmatprep.mubr.f32.mxu0 0.0
  %4435 = vmatmul.mubr.f32.gmra.mrb[0].mxu0 %v4307
  %v4436 = vpop.f32.mrb[0].mxu0
  %v4437 = vadd.f32 0.0, %v4436
  %v4438 = vpop.f32.mrb[0].mxu0
  %4439 = vmatprep.mubr.f32.mxu0 0.0
  %4440 = vmatmul.mubr.f32.gmra.mrb[0].mxu0 %v4310
  %v4441 = vpop.f32.mrb[0].mxu0
  %v4442 = vadd.f32 0.0, %v4441
  %v4443 = vpop.f32.mrb[0].mxu0
  %4444 = vmatprep.mubr.f32.mxu0 0.0
  %4445 = vmatmul.mubr.f32.gmra.mrb[0].mxu0 %v4313
  %v4446 = vpop.f32.mrb[0].mxu0
  %v4447 = vadd.f32 0.0, %v4446
  %v4448 = vpop.f32.mrb[0].mxu0
  %4449 = vmatprep.mubr.f32.mxu0 0.0
  %4450 = vmatmul.mubr.f32.gmra.mrb[0].mxu0 %v4316
  %v4451 = vpop.f32.mrb[0].mxu0
  %v4452 = vadd.f32 0.0, %v4451
  %v4453 = vpop.f32.mrb[0].mxu0
  %4454 = vmatprep.mubr.f32.mxu0 0.0
  %4455 = vmatmul.mubr.f32.gmra.mrb[0].mxu0 %v4319
  %v4456 = vpop.f32.mrb[0].mxu0
  %v4457 = vadd.f32 0.0, %v4456
  %v4458 = vpop.f32.mrb[0].mxu0
  %4459 = vdwg.mxu0
  %v4460 = vadd.f32 %v4242, %v4388
  %v4461 = vadd.f32 %v4243, %v4393
  %v4462 = vadd.f32 %v4244, %v4398
  %v4463 = vadd.f32 %v4245, %v4403
  %v4464 = vadd.f32 %v4246, %v4408
  %v4465 = vadd.f32 %v4247, %v4413
  %v4466 = vadd.f32 %v4248, %v4418
  %v4467 = vadd.f32 %v4249, %v4427
  %v4468 = vadd.f32 %v4250, %v4432
  %v4469 = vadd.f32 %v4251, %v4437
  %v4470 = vadd.f32 %v4252, %v4442
  %v4471 = vadd.f32 %v4253, %v4447
  %v4472 = vadd.f32 %v4254, %v4452
  %v4473 = vadd.f32 %v4255, %v4457
  %v4474 = vld [vmem:[#allocation2 + $0x180] sm:$0xff]
  %v4475 = vld [vmem:[#allocation2 + $0x188] sm:$0xff]
  %v4476 = vld [vmem:[#allocation2 + $0x190] sm:$0xff]
  %v4477 = vld [vmem:[#allocation2 + $0x198] sm:$0xff]
  %v4478 = vld [vmem:[#allocation2 + $0x1a0] sm:$0xff]
  %v4479 = vld [vmem:[#allocation2 + $0x1a8] sm:$0xff]
  %v4480 = vld [vmem:[#allocation2 + $0x1b0] sm:$0xff]
  %v4481 = vld [vmem:[#allocation2 + $0x1b8] sm:$0xff]
  %v4482 = vld [vmem:[#allocation2 + $0x1c0] sm:$0xff]
  %v4483 = vld [vmem:[#allocation2 + $0x1c8] sm:$0xff]
  %v4484 = vld [vmem:[#allocation2 + $0x1d0] sm:$0xff]
  %v4485 = vld [vmem:[#allocation2 + $0x1d8] sm:$0xff]
  %v4486 = vld [vmem:[#allocation2 + $0x1e0] sm:$0xff]
  %v4487 = vld [vmem:[#allocation2 + $0x1e8] sm:$0xff]
  %v4488 = vld [vmem:[#allocation2 + $0x1f0] sm:$0xff]
  %s4489 = scalar_lea.vmem %s4, 128
  %v4490 = vld [vmem:[%s4489] sm:$0xff]
  %v4491 = vld [vmem:[%s4489 + $0x8] sm:$0xff]
  %v4492 = vld [vmem:[%s4489 + $0x10] sm:$0xff]
  %v4493 = vld [vmem:[%s4489 + $0x18] sm:$0xff]
  %v4495 = vsel %vm3500, %v4474, 0
  %v4498 = vsel %vm3500, %v4475, 0
  %v4501 = vsel %vm3500, %v4476, 0
  %v4504 = vsel %vm3500, %v4477, 0
  %v4507 = vsel %vm3500, %v4478, 0
  %v4510 = vsel %vm3500, %v4479, 0
  %v4513 = vsel %vm3500, %v4480, 0
  %v4516 = vsel %vm3500, %v4481, 0
  %v4519 = vsel %vm3500, %v4482, 0
  %v4522 = vsel %vm3500, %v4483, 0
  %v4525 = vsel %vm3500, %v4484, 0
  %v4528 = vsel %vm3500, %v4485, 0
  %v4531 = vsel %vm3500, %v4486, 0
  %v4534 = vsel %vm3500, %v4487, 0
  %v4537 = vsel %vm3500, %v4488, 0
  %4539 = vmatprep.subr.mxu0 0.0
  %4540 = vmatpush1.msra.mxu0 %v4490
  %4541 = vmatprep.subr.mxu0 0.0
  %4542 = vmatpush1.msra.mxu0 %v4491
  %4543 = vmatprep.subr.mxu0 0.0
  %4544 = vmatpush1.msra.mxu0 %v4492
  %4545 = vmatprep.subr.mxu0 0.0
  %4546 = vmatpush1.msra.mxu0 %v4493
  %4547 = vmatprep.subr.mxu0 0.0
  %4548 = vmatpush1.msra.mxu0 0.0
  %4549 = vmatprep.subr.mxu0 0.0
  %4550 = vmatpush1.msra.mxu0 0.0
  %4551 = vmatprep.subr.mxu0 0.0
  %4552 = vmatpush1.msra.mxu0 0.0
  %4553 = vmatprep.subr.mxu0 0.0
  %4554 = vmatpush1.msra.mxu0 0.0
  %4555 = vmatprep.subr.mxu0 0.0
  %4556 = vmatpush1.msra.mxu0 0.0
  %4557 = vmatprep.subr.mxu0 0.0
  %4558 = vmatpush1.msra.mxu0 0.0
  %4559 = vmatprep.subr.mxu0 0.0
  %4560 = vmatpush1.msra.mxu0 0.0
  %4561 = vmatprep.subr.mxu0 0.0
  %4562 = vmatpush1.msra.mxu0 0.0
  %4563 = vmatprep.subr.mxu0 0.0
  %4564 = vmatpush1.msra.mxu0 0.0
  %4565 = vmatprep.subr.mxu0 0.0
  %4566 = vmatpush1.msra.mxu0 0.0
  %4567 = vmatprep.subr.mxu0 0.0
  %4568 = vmatpush1.msra.mxu0 0.0
  %4569 = vmatprep.subr.mxu0 0.0
  %4570 = vmatpush1.msra.mxu0 0.0
  %4571 = vmatprep.subr.mxu0 0.0
  %4572 = vmatpush1.msra.mxu0 0.0
  %4573 = vmatprep.subr.mxu0 0.0
  %4574 = vmatpush1.msra.mxu0 0.0
  %4575 = vmatprep.subr.mxu0 0.0
  %4576 = vmatpush1.msra.mxu0 0.0
  %4577 = vmatprep.subr.mxu0 0.0
  %4578 = vmatpush1.msra.mxu0 0.0
  %4579 = vmatprep.subr.mxu0 0.0
  %4580 = vmatpush1.msra.mxu0 0.0
  %4581 = vmatprep.subr.mxu0 0.0
  %4582 = vmatpush1.msra.mxu0 0.0
  %4583 = vmatprep.subr.mxu0 0.0
  %4584 = vmatpush1.msra.mxu0 0.0
  %4585 = vmatprep.subr.mxu0 0.0
  %4586 = vmatpush1.msra.mxu0 0.0
  %4587 = vmatprep.subr.mxu0 0.0
  %4588 = vmatpush1.msra.mxu0 0.0
  %4589 = vmatprep.subr.mxu0 0.0
  %4590 = vmatpush1.msra.mxu0 0.0
  %4591 = vmatprep.subr.mxu0 0.0
  %4592 = vmatpush1.msra.mxu0 0.0
  %4593 = vmatprep.subr.mxu0 0.0
  %4594 = vmatpush1.msra.mxu0 0.0
  %4595 = vmatprep.subr.mxu0 0.0
  %4596 = vmatpush1.msra.mxu0 0.0
  %4597 = vmatprep.subr.mxu0 0.0
  %4598 = vmatpush1.msra.mxu0 0.0
  %4599 = vmatprep.subr.mxu0 0.0
  %4600 = vmatpush1.msra.mxu0 0.0
  %4601 = vmatprep.subr.mxu0 0.0
  %4602 = vmatpush1.msra.mxu0 0.0
  %4603 = vmatprep.mubr.f32.mxu0 0.0
  %4604 = vmatmul.mubr.f32.gmra.mrb[0].mxu0 %v4495
  %v4605 = vpop.f32.mrb[0].mxu0
  %v4606 = vadd.f32 0.0, %v4605
  %v4607 = vpop.f32.mrb[0].mxu0
  %4608 = vmatprep.mubr.f32.mxu0 0.0
  %4609 = vmatmul.mubr.f32.gmra.mrb[0].mxu0 %v4498
  %v4610 = vpop.f32.mrb[0].mxu0
  %v4611 = vadd.f32 0.0, %v4610
  %v4612 = vpop.f32.mrb[0].mxu0
  %4613 = vmatprep.mubr.f32.mxu0 0.0
  %4614 = vmatmul.mubr.f32.gmra.mrb[0].mxu0 %v4501
  %v4615 = vpop.f32.mrb[0].mxu0
  %v4616 = vadd.f32 0.0, %v4615
  %v4617 = vpop.f32.mrb[0].mxu0
  %4618 = vmatprep.mubr.f32.mxu0 0.0
  %4619 = vmatmul.mubr.f32.gmra.mrb[0].mxu0 %v4504
  %v4620 = vpop.f32.mrb[0].mxu0
  %v4621 = vadd.f32 0.0, %v4620
  %v4622 = vpop.f32.mrb[0].mxu0
  %4623 = vmatprep.mubr.f32.mxu0 0.0
  %4624 = vmatmul.mubr.f32.gmra.mrb[0].mxu0 %v4507
  %v4625 = vpop.f32.mrb[0].mxu0
  %v4626 = vadd.f32 0.0, %v4625
  %v4627 = vpop.f32.mrb[0].mxu0
  %4628 = vmatprep.mubr.f32.mxu0 0.0
  %4629 = vmatmul.mubr.f32.gmra.mrb[0].mxu0 %v4510
  %v4630 = vpop.f32.mrb[0].mxu0
  %v4631 = vadd.f32 0.0, %v4630
  %v4632 = vpop.f32.mrb[0].mxu0
  %4633 = vmatprep.mubr.f32.mxu0 0.0
  %4634 = vmatmul.mubr.f32.gmra.mrb[0].mxu0 %v4513
  %v4635 = vpop.f32.mrb[0].mxu0
  %v4636 = vadd.f32 0.0, %v4635
  %v4637 = vpop.f32.mrb[0].mxu0
  %4638 = vmatprep.mubr.f32.mxu0 0.0
  %4639 = vmatmul.mubr.f32.gmra.mrb[0].mxu0 %v4516
  %v4640 = vpop.f32.mrb[0].mxu0
  %v4641 = vpop.f32.mrb[0].mxu0
  %4642 = vmatprep.mubr.f32.mxu0 0.0
  %4643 = vmatmul.mubr.f32.gmra.mrb[0].mxu0 %v4519
  %v4644 = vpop.f32.mrb[0].mxu0
  %v4645 = vadd.f32 0.0, %v4644
  %v4646 = vpop.f32.mrb[0].mxu0
  %4647 = vmatprep.mubr.f32.mxu0 0.0
  %4648 = vmatmul.mubr.f32.gmra.mrb[0].mxu0 %v4522
  %v4649 = vpop.f32.mrb[0].mxu0
  %v4650 = vadd.f32 0.0, %v4649
  %v4651 = vpop.f32.mrb[0].mxu0
  %4652 = vmatprep.mubr.f32.mxu0 0.0
  %4653 = vmatmul.mubr.f32.gmra.mrb[0].mxu0 %v4525
  %v4654 = vpop.f32.mrb[0].mxu0
  %v4655 = vadd.f32 0.0, %v4654
  %v4656 = vpop.f32.mrb[0].mxu0
  %4657 = vmatprep.mubr.f32.mxu0 0.0
  %4658 = vmatmul.mubr.f32.gmra.mrb[0].mxu0 %v4528
  %v4659 = vpop.f32.mrb[0].mxu0
  %v4660 = vadd.f32 0.0, %v4659
  %v4661 = vpop.f32.mrb[0].mxu0
  %4662 = vmatprep.mubr.f32.mxu0 0.0
  %4663 = vmatmul.mubr.f32.gmra.mrb[0].mxu0 %v4531
  %v4664 = vpop.f32.mrb[0].mxu0
  %v4665 = vadd.f32 0.0, %v4664
  %v4666 = vpop.f32.mrb[0].mxu0
  %4667 = vmatprep.mubr.f32.mxu0 0.0
  %4668 = vmatmul.mubr.f32.gmra.mrb[0].mxu0 %v4534
  %v4669 = vpop.f32.mrb[0].mxu0
  %v4670 = vadd.f32 0.0, %v4669
  %v4671 = vpop.f32.mrb[0].mxu0
  %4672 = vmatprep.mubr.f32.mxu0 0.0
  %4673 = vmatmul.mubr.f32.gmra.mrb[0].mxu0 %v4537
  %v4674 = vpop.f32.mrb[0].mxu0
  %v4675 = vadd.f32 0.0, %v4674
  %v4676 = vpop.f32.mrb[0].mxu0
  %4677 = vdwg.mxu0
  %v4678 = vadd.f32 %v4460, %v4606
  %v4679 = vadd.f32 %v4461, %v4611
  %v4680 = vadd.f32 %v4462, %v4616
  %v4681 = vadd.f32 %v4463, %v4621
  %v4682 = vadd.f32 %v4464, %v4626
  %v4683 = vadd.f32 %v4465, %v4631
  %v4684 = vadd.f32 %v4466, %v4636
  %v4685 = vadd.f32 %v4467, %v4645
  %v4686 = vadd.f32 %v4468, %v4650
  %v4687 = vadd.f32 %v4469, %v4655
  %v4688 = vadd.f32 %v4470, %v4660
  %v4689 = vadd.f32 %v4471, %v4665
  %v4690 = vadd.f32 %v4472, %v4670
  %v4691 = vadd.f32 %v4473, %v4675
  %v4692 = vld [vmem:[#allocation2 + $0x101] sm:$0xff]
  %v4693 = vld [vmem:[#allocation2 + $0x109] sm:$0xff]
  %v4694 = vld [vmem:[#allocation2 + $0x111] sm:$0xff]
  %v4695 = vld [vmem:[#allocation2 + $0x119] sm:$0xff]
  %v4696 = vld [vmem:[#allocation2 + $0x121] sm:$0xff]
  %v4697 = vld [vmem:[#allocation2 + $0x129] sm:$0xff]
  %v4698 = vld [vmem:[#allocation2 + $0x131] sm:$0xff]
  %v4699 = vld [vmem:[#allocation2 + $0x139] sm:$0xff]
  %v4700 = vld [vmem:[#allocation2 + $0x141] sm:$0xff]
  %v4701 = vld [vmem:[#allocation2 + $0x149] sm:$0xff]
  %v4702 = vld [vmem:[#allocation2 + $0x151] sm:$0xff]
  %v4703 = vld [vmem:[#allocation2 + $0x159] sm:$0xff]
  %v4704 = vld [vmem:[#allocation2 + $0x161] sm:$0xff]
  %v4705 = vld [vmem:[#allocation2 + $0x169] sm:$0xff]
  %v4706 = vld [vmem:[#allocation2 + $0x171] sm:$0xff]
  %s4707 = scalar_lea.vmem %s4, 160
  %v4708 = vld [vmem:[%s4707] sm:$0xff]
  %v4709 = vld [vmem:[%s4707 + $0x8] sm:$0xff]
  %v4710 = vld [vmem:[%s4707 + $0x10] sm:$0xff]
  %v4711 = vld [vmem:[%s4707 + $0x18] sm:$0xff]
  %v4713 = vsel %vm3500, %v4692, 0
  %v4716 = vsel %vm3500, %v4693, 0
  %v4719 = vsel %vm3500, %v4694, 0
  %v4722 = vsel %vm3500, %v4695, 0
  %v4725 = vsel %vm3500, %v4696, 0
  %v4728 = vsel %vm3500, %v4697, 0
  %v4731 = vsel %vm3500, %v4698, 0
  %v4734 = vsel %vm3500, %v4699, 0
  %v4737 = vsel %vm3500, %v4700, 0
  %v4740 = vsel %vm3500, %v4701, 0
  %v4743 = vsel %vm3500, %v4702, 0
  %v4746 = vsel %vm3500, %v4703, 0
  %v4749 = vsel %vm3500, %v4704, 0
  %v4752 = vsel %vm3500, %v4705, 0
  %v4755 = vsel %vm3500, %v4706, 0
  %4757 = vmatprep.subr.mxu0 0.0
  %4758 = vmatpush1.msra.mxu0 %v4708
  %4759 = vmatprep.subr.mxu0 0.0
  %4760 = vmatpush1.msra.mxu0 %v4709
  %4761 = vmatprep.subr.mxu0 0.0
  %4762 = vmatpush1.msra.mxu0 %v4710
  %4763 = vmatprep.subr.mxu0 0.0
  %4764 = vmatpush1.msra.mxu0 %v4711
  %4765 = vmatprep.subr.mxu0 0.0
  %4766 = vmatpush1.msra.mxu0 0.0
  %4767 = vmatprep.subr.mxu0 0.0
  %4768 = vmatpush1.msra.mxu0 0.0
  %4769 = vmatprep.subr.mxu0 0.0
  %4770 = vmatpush1.msra.mxu0 0.0
  %4771 = vmatprep.subr.mxu0 0.0
  %4772 = vmatpush1.msra.mxu0 0.0
  %4773 = vmatprep.subr.mxu0 0.0
  %4774 = vmatpush1.msra.mxu0 0.0
  %4775 = vmatprep.subr.mxu0 0.0
  %4776 = vmatpush1.msra.mxu0 0.0
  %4777 = vmatprep.subr.mxu0 0.0
  %4778 = vmatpush1.msra.mxu0 0.0
  %4779 = vmatprep.subr.mxu0 0.0
  %4780 = vmatpush1.msra.mxu0 0.0
  %4781 = vmatprep.subr.mxu0 0.0
  %4782 = vmatpush1.msra.mxu0 0.0
  %4783 = vmatprep.subr.mxu0 0.0
  %4784 = vmatpush1.msra.mxu0 0.0
  %4785 = vmatprep.subr.mxu0 0.0
  %4786 = vmatpush1.msra.mxu0 0.0
  %4787 = vmatprep.subr.mxu0 0.0
  %4788 = vmatpush1.msra.mxu0 0.0
  %4789 = vmatprep.subr.mxu0 0.0
  %4790 = vmatpush1.msra.mxu0 0.0
  %4791 = vmatprep.subr.mxu0 0.0
  %4792 = vmatpush1.msra.mxu0 0.0
  %4793 = vmatprep.subr.mxu0 0.0
  %4794 = vmatpush1.msra.mxu0 0.0
  %4795 = vmatprep.subr.mxu0 0.0
  %4796 = vmatpush1.msra.mxu0 0.0
  %4797 = vmatprep.subr.mxu0 0.0
  %4798 = vmatpush1.msra.mxu0 0.0
  %4799 = vmatprep.subr.mxu0 0.0
  %4800 = vmatpush1.msra.mxu0 0.0
  %4801 = vmatprep.subr.mxu0 0.0
  %4802 = vmatpush1.msra.mxu0 0.0
  %4803 = vmatprep.subr.mxu0 0.0
  %4804 = vmatpush1.msra.mxu0 0.0
  %4805 = vmatprep.subr.mxu0 0.0
  %4806 = vmatpush1.msra.mxu0 0.0
  %4807 = vmatprep.subr.mxu0 0.0
  %4808 = vmatpush1.msra.mxu0 0.0
  %4809 = vmatprep.subr.mxu0 0.0
  %4810 = vmatpush1.msra.mxu0 0.0
  %4811 = vmatprep.subr.mxu0 0.0
  %4812 = vmatpush1.msra.mxu0 0.0
  %4813 = vmatprep.subr.mxu0 0.0
  %4814 = vmatpush1.msra.mxu0 0.0
  %4815 = vmatprep.subr.mxu0 0.0
  %4816 = vmatpush1.msra.mxu0 0.0
  %4817 = vmatprep.subr.mxu0 0.0
  %4818 = vmatpush1.msra.mxu0 0.0
  %4819 = vmatprep.subr.mxu0 0.0
  %4820 = vmatpush1.msra.mxu0 0.0
  %4821 = vmatprep.mubr.f32.mxu0 0.0
  %4822 = vmatmul.mubr.f32.gmra.mrb[0].mxu0 %v4713
  %v4823 = vpop.f32.mrb[0].mxu0
  %v4824 = vadd.f32 0.0, %v4823
  %v4825 = vpop.f32.mrb[0].mxu0
  %4826 = vmatprep.mubr.f32.mxu0 0.0
  %4827 = vmatmul.mubr.f32.gmra.mrb[0].mxu0 %v4716
  %v4828 = vpop.f32.mrb[0].mxu0
  %v4829 = vadd.f32 0.0, %v4828
  %v4830 = vpop.f32.mrb[0].mxu0
  %4831 = vmatprep.mubr.f32.mxu0 0.0
  %4832 = vmatmul.mubr.f32.gmra.mrb[0].mxu0 %v4719
  %v4833 = vpop.f32.mrb[0].mxu0
  %v4834 = vadd.f32 0.0, %v4833
  %v4835 = vpop.f32.mrb[0].mxu0
  %4836 = vmatprep.mubr.f32.mxu0 0.0
  %4837 = vmatmul.mubr.f32.gmra.mrb[0].mxu0 %v4722
  %v4838 = vpop.f32.mrb[0].mxu0
  %v4839 = vadd.f32 0.0, %v4838
  %v4840 = vpop.f32.mrb[0].mxu0
  %4841 = vmatprep.mubr.f32.mxu0 0.0
  %4842 = vmatmul.mubr.f32.gmra.mrb[0].mxu0 %v4725
  %v4843 = vpop.f32.mrb[0].mxu0
  %v4844 = vadd.f32 0.0, %v4843
  %v4845 = vpop.f32.mrb[0].mxu0
  %4846 = vmatprep.mubr.f32.mxu0 0.0
  %4847 = vmatmul.mubr.f32.gmra.mrb[0].mxu0 %v4728
  %v4848 = vpop.f32.mrb[0].mxu0
  %v4849 = vadd.f32 0.0, %v4848
  %v4850 = vpop.f32.mrb[0].mxu0
  %4851 = vmatprep.mubr.f32.mxu0 0.0
  %4852 = vmatmul.mubr.f32.gmra.mrb[0].mxu0 %v4731
  %v4853 = vpop.f32.mrb[0].mxu0
  %v4854 = vadd.f32 0.0, %v4853
  %v4855 = vpop.f32.mrb[0].mxu0
  %4856 = vmatprep.mubr.f32.mxu0 0.0
  %4857 = vmatmul.mubr.f32.gmra.mrb[0].mxu0 %v4734
  %v4858 = vpop.f32.mrb[0].mxu0
  %v4859 = vpop.f32.mrb[0].mxu0
  %4860 = vmatprep.mubr.f32.mxu0 0.0
  %4861 = vmatmul.mubr.f32.gmra.mrb[0].mxu0 %v4737
  %v4862 = vpop.f32.mrb[0].mxu0
  %v4863 = vadd.f32 0.0, %v4862
  %v4864 = vpop.f32.mrb[0].mxu0
  %4865 = vmatprep.mubr.f32.mxu0 0.0
  %4866 = vmatmul.mubr.f32.gmra.mrb[0].mxu0 %v4740
  %v4867 = vpop.f32.mrb[0].mxu0
  %v4868 = vadd.f32 0.0, %v4867
  %v4869 = vpop.f32.mrb[0].mxu0
  %4870 = vmatprep.mubr.f32.mxu0 0.0
  %4871 = vmatmul.mubr.f32.gmra.mrb[0].mxu0 %v4743
  %v4872 = vpop.f32.mrb[0].mxu0
  %v4873 = vadd.f32 0.0, %v4872
  %v4874 = vpop.f32.mrb[0].mxu0
  %4875 = vmatprep.mubr.f32.mxu0 0.0
  %4876 = vmatmul.mubr.f32.gmra.mrb[0].mxu0 %v4746
  %v4877 = vpop.f32.mrb[0].mxu0
  %v4878 = vadd.f32 0.0, %v4877
  %v4879 = vpop.f32.mrb[0].mxu0
  %4880 = vmatprep.mubr.f32.mxu0 0.0
  %4881 = vmatmul.mubr.f32.gmra.mrb[0].mxu0 %v4749
  %v4882 = vpop.f32.mrb[0].mxu0
  %v4883 = vadd.f32 0.0, %v4882
  %v4884 = vpop.f32.mrb[0].mxu0
  %4885 = vmatprep.mubr.f32.mxu0 0.0
  %4886 = vmatmul.mubr.f32.gmra.mrb[0].mxu0 %v4752
  %v4887 = vpop.f32.mrb[0].mxu0
  %v4888 = vadd.f32 0.0, %v4887
  %v4889 = vpop.f32.mrb[0].mxu0
  %4890 = vmatprep.mubr.f32.mxu0 0.0
  %4891 = vmatmul.mubr.f32.gmra.mrb[0].mxu0 %v4755
  %v4892 = vpop.f32.mrb[0].mxu0
  %v4893 = vadd.f32 0.0, %v4892
  %v4894 = vpop.f32.mrb[0].mxu0
  %4895 = vdwg.mxu0
  %v4896 = vadd.f32 %v4678, %v4824
  %v4897 = vadd.f32 %v4679, %v4829
  %v4898 = vadd.f32 %v4680, %v4834
  %v4899 = vadd.f32 %v4681, %v4839
  %v4900 = vadd.f32 %v4682, %v4844
  %v4901 = vadd.f32 %v4683, %v4849
  %v4902 = vadd.f32 %v4684, %v4854
  %v4903 = vadd.f32 %v4685, %v4863
  %v4904 = vadd.f32 %v4686, %v4868
  %v4905 = vadd.f32 %v4687, %v4873
  %v4906 = vadd.f32 %v4688, %v4878
  %v4907 = vadd.f32 %v4689, %v4883
  %v4908 = vadd.f32 %v4690, %v4888
  %v4909 = vadd.f32 %v4691, %v4893
  %v4910 = vld [vmem:[#allocation2 + $0x8] sm:$0xff]
  %v4911 = vld [vmem:[#allocation2 + $0x10] sm:$0xff]
  %v4912 = vld [vmem:[#allocation2 + $0x18] sm:$0xff]
  %v4913 = vld [vmem:[#allocation2 + $0x20] sm:$0xff]
  %v4914 = vld [vmem:[#allocation2 + $0x28] sm:$0xff]
  %v4915 = vld [vmem:[#allocation2 + $0x30] sm:$0xff]
  %v4916 = vld [vmem:[#allocation2 + $0x38] sm:$0xff]
  %v4917 = vld [vmem:[#allocation2 + $0x40] sm:$0xff]
  %v4918 = vld [vmem:[#allocation2 + $0x48] sm:$0xff]
  %v4919 = vld [vmem:[#allocation2 + $0x50] sm:$0xff]
  %v4920 = vld [vmem:[#allocation2 + $0x58] sm:$0xff]
  %v4921 = vld [vmem:[#allocation2 + $0x60] sm:$0xff]
  %v4922 = vld [vmem:[#allocation2 + $0x68] sm:$0xff]
  %v4923 = vld [vmem:[#allocation2 + $0x70] sm:$0xff]
  %v4924 = vld [vmem:[#allocation2 + $0x78] sm:$0xff]
  %s4925 = scalar_lea.vmem %s4, 192
  %v4926 = vld [vmem:[%s4925] sm:$0xff]
  %v4927 = vld [vmem:[%s4925 + $0x8] sm:$0xff]
  %v4928 = vld [vmem:[%s4925 + $0x10] sm:$0xff]
  %v4929 = vld [vmem:[%s4925 + $0x18] sm:$0xff]
  %v4931 = vsel %vm3500, %v4910, 0
  %v4934 = vsel %vm3500, %v4911, 0
  %v4937 = vsel %vm3500, %v4912, 0
  %v4940 = vsel %vm3500, %v4913, 0
  %v4943 = vsel %vm3500, %v4914, 0
  %v4946 = vsel %vm3500, %v4915, 0
  %v4949 = vsel %vm3500, %v4916, 0
  %v4952 = vsel %vm3500, %v4917, 0
  %v4955 = vsel %vm3500, %v4918, 0
  %v4958 = vsel %vm3500, %v4919, 0
  %v4961 = vsel %vm3500, %v4920, 0
  %v4964 = vsel %vm3500, %v4921, 0
  %v4967 = vsel %vm3500, %v4922, 0
  %v4970 = vsel %vm3500, %v4923, 0
  %v4973 = vsel %vm3500, %v4924, 0
  %4975 = vmatprep.subr.mxu0 0.0
  %4976 = vmatpush1.msra.mxu0 %v4926
  %4977 = vmatprep.subr.mxu0 0.0
  %4978 = vmatpush1.msra.mxu0 %v4927
  %4979 = vmatprep.subr.mxu0 0.0
  %4980 = vmatpush1.msra.mxu0 %v4928
  %4981 = vmatprep.subr.mxu0 0.0
  %4982 = vmatpush1.msra.mxu0 %v4929
  %4983 = vmatprep.subr.mxu0 0.0
  %4984 = vmatpush1.msra.mxu0 0.0
  %4985 = vmatprep.subr.mxu0 0.0
  %4986 = vmatpush1.msra.mxu0 0.0
  %4987 = vmatprep.subr.mxu0 0.0
  %4988 = vmatpush1.msra.mxu0 0.0
  %4989 = vmatprep.subr.mxu0 0.0
  %4990 = vmatpush1.msra.mxu0 0.0
  %4991 = vmatprep.subr.mxu0 0.0
  %4992 = vmatpush1.msra.mxu0 0.0
  %4993 = vmatprep.subr.mxu0 0.0
  %4994 = vmatpush1.msra.mxu0 0.0
  %4995 = vmatprep.subr.mxu0 0.0
  %4996 = vmatpush1.msra.mxu0 0.0
  %4997 = vmatprep.subr.mxu0 0.0
  %4998 = vmatpush1.msra.mxu0 0.0
  %4999 = vmatprep.subr.mxu0 0.0
  %5000 = vmatpush1.msra.mxu0 0.0
  %5001 = vmatprep.subr.mxu0 0.0
  %5002 = vmatpush1.msra.mxu0 0.0
  %5003 = vmatprep.subr.mxu0 0.0
  %5004 = vmatpush1.msra.mxu0 0.0
  %5005 = vmatprep.subr.mxu0 0.0
  %5006 = vmatpush1.msra.mxu0 0.0
  %5007 = vmatprep.subr.mxu0 0.0
  %5008 = vmatpush1.msra.mxu0 0.0
  %5009 = vmatprep.subr.mxu0 0.0
  %5010 = vmatpush1.msra.mxu0 0.0
  %5011 = vmatprep.subr.mxu0 0.0
  %5012 = vmatpush1.msra.mxu0 0.0
  %5013 = vmatprep.subr.mxu0 0.0
  %5014 = vmatpush1.msra.mxu0 0.0
  %5015 = vmatprep.subr.mxu0 0.0
  %5016 = vmatpush1.msra.mxu0 0.0
  %5017 = vmatprep.subr.mxu0 0.0
  %5018 = vmatpush1.msra.mxu0 0.0
  %5019 = vmatprep.subr.mxu0 0.0
  %5020 = vmatpush1.msra.mxu0 0.0
  %5021 = vmatprep.subr.mxu0 0.0
  %5022 = vmatpush1.msra.mxu0 0.0
  %5023 = vmatprep.subr.mxu0 0.0
  %5024 = vmatpush1.msra.mxu0 0.0
  %5025 = vmatprep.subr.mxu0 0.0
  %5026 = vmatpush1.msra.mxu0 0.0
  %5027 = vmatprep.subr.mxu0 0.0
  %5028 = vmatpush1.msra.mxu0 0.0
  %5029 = vmatprep.subr.mxu0 0.0
  %5030 = vmatpush1.msra.mxu0 0.0
  %5031 = vmatprep.subr.mxu0 0.0
  %5032 = vmatpush1.msra.mxu0 0.0
  %5033 = vmatprep.subr.mxu0 0.0
  %5034 = vmatpush1.msra.mxu0 0.0
  %5035 = vmatprep.subr.mxu0 0.0
  %5036 = vmatpush1.msra.mxu0 0.0
  %5037 = vmatprep.subr.mxu0 0.0
  %5038 = vmatpush1.msra.mxu0 0.0
  %5039 = vmatprep.mubr.f32.mxu0 0.0
  %5040 = vmatmul.mubr.f32.gmra.mrb[0].mxu0 %v4931
  %v5041 = vpop.f32.mrb[0].mxu0
  %v5042 = vadd.f32 0.0, %v5041
  %v5043 = vpop.f32.mrb[0].mxu0
  %5044 = vmatprep.mubr.f32.mxu0 0.0
  %5045 = vmatmul.mubr.f32.gmra.mrb[0].mxu0 %v4934
  %v5046 = vpop.f32.mrb[0].mxu0
  %v5047 = vadd.f32 0.0, %v5046
  %v5048 = vpop.f32.mrb[0].mxu0
  %5049 = vmatprep.mubr.f32.mxu0 0.0
  %5050 = vmatmul.mubr.f32.gmra.mrb[0].mxu0 %v4937
  %v5051 = vpop.f32.mrb[0].mxu0
  %v5052 = vadd.f32 0.0, %v5051
  %v5053 = vpop.f32.mrb[0].mxu0
  %5054 = vmatprep.mubr.f32.mxu0 0.0
  %5055 = vmatmul.mubr.f32.gmra.mrb[0].mxu0 %v4940
  %v5056 = vpop.f32.mrb[0].mxu0
  %v5057 = vadd.f32 0.0, %v5056
  %v5058 = vpop.f32.mrb[0].mxu0
  %5059 = vmatprep.mubr.f32.mxu0 0.0
  %5060 = vmatmul.mubr.f32.gmra.mrb[0].mxu0 %v4943
  %v5061 = vpop.f32.mrb[0].mxu0
  %v5062 = vadd.f32 0.0, %v5061
  %v5063 = vpop.f32.mrb[0].mxu0
  %5064 = vmatprep.mubr.f32.mxu0 0.0
  %5065 = vmatmul.mubr.f32.gmra.mrb[0].mxu0 %v4946
  %v5066 = vpop.f32.mrb[0].mxu0
  %v5067 = vadd.f32 0.0, %v5066
  %v5068 = vpop.f32.mrb[0].mxu0
  %5069 = vmatprep.mubr.f32.mxu0 0.0
  %5070 = vmatmul.mubr.f32.gmra.mrb[0].mxu0 %v4949
  %v5071 = vpop.f32.mrb[0].mxu0
  %v5072 = vadd.f32 0.0, %v5071
  %v5073 = vpop.f32.mrb[0].mxu0
  %5074 = vmatprep.mubr.f32.mxu0 0.0
  %5075 = vmatmul.mubr.f32.gmra.mrb[0].mxu0 %v4952
  %v5076 = vpop.f32.mrb[0].mxu0
  %v5077 = vpop.f32.mrb[0].mxu0
  %5078 = vmatprep.mubr.f32.mxu0 0.0
  %5079 = vmatmul.mubr.f32.gmra.mrb[0].mxu0 %v4955
  %v5080 = vpop.f32.mrb[0].mxu0
  %v5081 = vadd.f32 0.0, %v5080
  %v5082 = vpop.f32.mrb[0].mxu0
  %5083 = vmatprep.mubr.f32.mxu0 0.0
  %5084 = vmatmul.mubr.f32.gmra.mrb[0].mxu0 %v4958
  %v5085 = vpop.f32.mrb[0].mxu0
  %v5086 = vadd.f32 0.0, %v5085
  %v5087 = vpop.f32.mrb[0].mxu0
  %5088 = vmatprep.mubr.f32.mxu0 0.0
  %5089 = vmatmul.mubr.f32.gmra.mrb[0].mxu0 %v4961
  %v5090 = vpop.f32.mrb[0].mxu0
  %v5091 = vadd.f32 0.0, %v5090
  %v5092 = vpop.f32.mrb[0].mxu0
  %5093 = vmatprep.mubr.f32.mxu0 0.0
  %5094 = vmatmul.mubr.f32.gmra.mrb[0].mxu0 %v4964
  %v5095 = vpop.f32.mrb[0].mxu0
  %v5096 = vadd.f32 0.0, %v5095
  %v5097 = vpop.f32.mrb[0].mxu0
  %5098 = vmatprep.mubr.f32.mxu0 0.0
  %5099 = vmatmul.mubr.f32.gmra.mrb[0].mxu0 %v4967
  %v5100 = vpop.f32.mrb[0].mxu0
  %v5101 = vadd.f32 0.0, %v5100
  %v5102 = vpop.f32.mrb[0].mxu0
  %5103 = vmatprep.mubr.f32.mxu0 0.0
  %5104 = vmatmul.mubr.f32.gmra.mrb[0].mxu0 %v4970
  %v5105 = vpop.f32.mrb[0].mxu0
  %v5106 = vadd.f32 0.0, %v5105
  %v5107 = vpop.f32.mrb[0].mxu0
  %5108 = vmatprep.mubr.f32.mxu0 0.0
  %5109 = vmatmul.mubr.f32.gmra.mrb[0].mxu0 %v4973
  %v5110 = vpop.f32.mrb[0].mxu0
  %v5111 = vadd.f32 0.0, %v5110
  %v5112 = vpop.f32.mrb[0].mxu0
  %5113 = vdwg.mxu0
  %v5114 = vadd.f32 %v4896, %v5042
  %v5115 = vadd.f32 %v4897, %v5047
  %v5116 = vadd.f32 %v4898, %v5052
  %v5117 = vadd.f32 %v4899, %v5057
  %v5118 = vadd.f32 %v4900, %v5062
  %v5119 = vadd.f32 %v4901, %v5067
  %v5120 = vadd.f32 %v4902, %v5072
  %v5121 = vadd.f32 %v4903, %v5081
  %v5122 = vadd.f32 %v4904, %v5086
  %v5123 = vadd.f32 %v4905, %v5091
  %v5124 = vadd.f32 %v4906, %v5096
  %v5125 = vadd.f32 %v4907, %v5101
  %v5126 = vadd.f32 %v4908, %v5106
  %v5127 = vadd.f32 %v4909, %v5111
  %v5128 = vld [vmem:[#allocation2 + $0x88] sm:$0xff]
  %v5129 = vld [vmem:[#allocation2 + $0x90] sm:$0xff]
  %v5130 = vld [vmem:[#allocation2 + $0x98] sm:$0xff]
  %v5131 = vld [vmem:[#allocation2 + $0xa0] sm:$0xff]
  %v5132 = vld [vmem:[#allocation2 + $0xa8] sm:$0xff]
  %v5133 = vld [vmem:[#allocation2 + $0xb0] sm:$0xff]
  %v5134 = vld [vmem:[#allocation2 + $0xb8] sm:$0xff]
  %v5135 = vld [vmem:[#allocation2 + $0xc0] sm:$0xff]
  %v5136 = vld [vmem:[#allocation2 + $0xc8] sm:$0xff]
  %v5137 = vld [vmem:[#allocation2 + $0xd0] sm:$0xff]
  %v5138 = vld [vmem:[#allocation2 + $0xd8] sm:$0xff]
  %v5139 = vld [vmem:[#allocation2 + $0xe0] sm:$0xff]
  %v5140 = vld [vmem:[#allocation2 + $0xe8] sm:$0xff]
  %v5141 = vld [vmem:[#allocation2 + $0xf0] sm:$0xff]
  %v5142 = vld [vmem:[#allocation2 + $0xf8] sm:$0xff]
  %s5143 = scalar_lea.vmem %s4, 224
  %v5144 = vld [vmem:[%s5143] sm:$0xff]
  %v5145 = vld [vmem:[%s5143 + $0x8] sm:$0xff]
  %v5146 = vld [vmem:[%s5143 + $0x10] sm:$0xff]
  %v5147 = vld [vmem:[%s5143 + $0x18] sm:$0xff]
  %v5149 = vsel %vm3500, %v5128, 0
  %v5152 = vsel %vm3500, %v5129, 0
  %v5155 = vsel %vm3500, %v5130, 0
  %v5158 = vsel %vm3500, %v5131, 0
  %v5161 = vsel %vm3500, %v5132, 0
  %v5164 = vsel %vm3500, %v5133, 0
  %v5167 = vsel %vm3500, %v5134, 0
  %v5170 = vsel %vm3500, %v5135, 0
  %v5173 = vsel %vm3500, %v5136, 0
  %v5176 = vsel %vm3500, %v5137, 0
  %v5179 = vsel %vm3500, %v5138, 0
  %v5182 = vsel %vm3500, %v5139, 0
  %v5185 = vsel %vm3500, %v5140, 0
  %v5188 = vsel %vm3500, %v5141, 0
  %v5191 = vsel %vm3500, %v5142, 0
  %5193 = vmatprep.subr.mxu0 0.0
  %5194 = vmatpush1.msra.mxu0 %v5144
  %5195 = vmatprep.subr.mxu0 0.0
  %5196 = vmatpush1.msra.mxu0 %v5145
  %5197 = vmatprep.subr.mxu0 0.0
  %5198 = vmatpush1.msra.mxu0 %v5146
  %5199 = vmatprep.subr.mxu0 0.0
  %5200 = vmatpush1.msra.mxu0 %v5147
  %5201 = vmatprep.subr.mxu0 0.0
  %5202 = vmatpush1.msra.mxu0 0.0
  %5203 = vmatprep.subr.mxu0 0.0
  %5204 = vmatpush1.msra.mxu0 0.0
  %5205 = vmatprep.subr.mxu0 0.0
  %5206 = vmatpush1.msra.mxu0 0.0
  %5207 = vmatprep.subr.mxu0 0.0
  %5208 = vmatpush1.msra.mxu0 0.0
  %5209 = vmatprep.subr.mxu0 0.0
  %5210 = vmatpush1.msra.mxu0 0.0
  %5211 = vmatprep.subr.mxu0 0.0
  %5212 = vmatpush1.msra.mxu0 0.0
  %5213 = vmatprep.subr.mxu0 0.0
  %5214 = vmatpush1.msra.mxu0 0.0
  %5215 = vmatprep.subr.mxu0 0.0
  %5216 = vmatpush1.msra.mxu0 0.0
  %5217 = vmatprep.subr.mxu0 0.0
  %5218 = vmatpush1.msra.mxu0 0.0
  %5219 = vmatprep.subr.mxu0 0.0
  %5220 = vmatpush1.msra.mxu0 0.0
  %5221 = vmatprep.subr.mxu0 0.0
  %5222 = vmatpush1.msra.mxu0 0.0
  %5223 = vmatprep.subr.mxu0 0.0
  %5224 = vmatpush1.msra.mxu0 0.0
  %5225 = vmatprep.subr.mxu0 0.0
  %5226 = vmatpush1.msra.mxu0 0.0
  %5227 = vmatprep.subr.mxu0 0.0
  %5228 = vmatpush1.msra.mxu0 0.0
  %5229 = vmatprep.subr.mxu0 0.0
  %5230 = vmatpush1.msra.mxu0 0.0
  %5231 = vmatprep.subr.mxu0 0.0
  %5232 = vmatpush1.msra.mxu0 0.0
  %5233 = vmatprep.subr.mxu0 0.0
  %5234 = vmatpush1.msra.mxu0 0.0
  %5235 = vmatprep.subr.mxu0 0.0
  %5236 = vmatpush1.msra.mxu0 0.0
  %5237 = vmatprep.subr.mxu0 0.0
  %5238 = vmatpush1.msra.mxu0 0.0
  %5239 = vmatprep.subr.mxu0 0.0
  %5240 = vmatpush1.msra.mxu0 0.0
  %5241 = vmatprep.subr.mxu0 0.0
  %5242 = vmatpush1.msra.mxu0 0.0
  %5243 = vmatprep.subr.mxu0 0.0
  %5244 = vmatpush1.msra.mxu0 0.0
  %5245 = vmatprep.subr.mxu0 0.0
  %5246 = vmatpush1.msra.mxu0 0.0
  %5247 = vmatprep.subr.mxu0 0.0
  %5248 = vmatpush1.msra.mxu0 0.0
  %5249 = vmatprep.subr.mxu0 0.0
  %5250 = vmatpush1.msra.mxu0 0.0
  %5251 = vmatprep.subr.mxu0 0.0
  %5252 = vmatpush1.msra.mxu0 0.0
  %5253 = vmatprep.subr.mxu0 0.0
  %5254 = vmatpush1.msra.mxu0 0.0
  %5255 = vmatprep.subr.mxu0 0.0
  %5256 = vmatpush1.msra.mxu0 0.0
  %5257 = vmatprep.mubr.f32.mxu0 0.0
  %5258 = vmatmul.mubr.f32.gmra.mrb[0].mxu0 %v5149
  %v5259 = vpop.f32.mrb[0].mxu0
  %v5260 = vadd.f32 0.0, %v5259
  %v5261 = vpop.f32.mrb[0].mxu0
  %5262 = vmatprep.mubr.f32.mxu0 0.0
  %5263 = vmatmul.mubr.f32.gmra.mrb[0].mxu0 %v5152
  %v5264 = vpop.f32.mrb[0].mxu0
  %v5265 = vadd.f32 0.0, %v5264
  %v5266 = vpop.f32.mrb[0].mxu0
  %5267 = vmatprep.mubr.f32.mxu0 0.0
  %5268 = vmatmul.mubr.f32.gmra.mrb[0].mxu0 %v5155
  %v5269 = vpop.f32.mrb[0].mxu0
  %v5270 = vadd.f32 0.0, %v5269
  %v5271 = vpop.f32.mrb[0].mxu0
  %5272 = vmatprep.mubr.f32.mxu0 0.0
  %5273 = vmatmul.mubr.f32.gmra.mrb[0].mxu0 %v5158
  %v5274 = vpop.f32.mrb[0].mxu0
  %v5275 = vadd.f32 0.0, %v5274
  %v5276 = vpop.f32.mrb[0].mxu0
  %5277 = vmatprep.mubr.f32.mxu0 0.0
  %5278 = vmatmul.mubr.f32.gmra.mrb[0].mxu0 %v5161
  %v5279 = vpop.f32.mrb[0].mxu0
  %v5280 = vadd.f32 0.0, %v5279
  %v5281 = vpop.f32.mrb[0].mxu0
  %5282 = vmatprep.mubr.f32.mxu0 0.0
  %5283 = vmatmul.mubr.f32.gmra.mrb[0].mxu0 %v5164
  %v5284 = vpop.f32.mrb[0].mxu0
  %v5285 = vadd.f32 0.0, %v5284
  %v5286 = vpop.f32.mrb[0].mxu0
  %5287 = vmatprep.mubr.f32.mxu0 0.0
  %5288 = vmatmul.mubr.f32.gmra.mrb[0].mxu0 %v5167
  %v5289 = vpop.f32.mrb[0].mxu0
  %v5290 = vadd.f32 0.0, %v5289
  %v5291 = vpop.f32.mrb[0].mxu0
  %5292 = vmatprep.mubr.f32.mxu0 0.0
  %5293 = vmatmul.mubr.f32.gmra.mrb[0].mxu0 %v5170
  %v5294 = vpop.f32.mrb[0].mxu0
  %v5295 = vpop.f32.mrb[0].mxu0
  %5296 = vmatprep.mubr.f32.mxu0 0.0
  %5297 = vmatmul.mubr.f32.gmra.mrb[0].mxu0 %v5173
  %v5298 = vpop.f32.mrb[0].mxu0
  %v5299 = vadd.f32 0.0, %v5298
  %v5300 = vpop.f32.mrb[0].mxu0
  %5301 = vmatprep.mubr.f32.mxu0 0.0
  %5302 = vmatmul.mubr.f32.gmra.mrb[0].mxu0 %v5176
  %v5303 = vpop.f32.mrb[0].mxu0
  %v5304 = vadd.f32 0.0, %v5303
  %v5305 = vpop.f32.mrb[0].mxu0
  %5306 = vmatprep.mubr.f32.mxu0 0.0
  %5307 = vmatmul.mubr.f32.gmra.mrb[0].mxu0 %v5179
  %v5308 = vpop.f32.mrb[0].mxu0
  %v5309 = vadd.f32 0.0, %v5308
  %v5310 = vpop.f32.mrb[0].mxu0
  %5311 = vmatprep.mubr.f32.mxu0 0.0
  %5312 = vmatmul.mubr.f32.gmra.mrb[0].mxu0 %v5182
  %v5313 = vpop.f32.mrb[0].mxu0
  %v5314 = vadd.f32 0.0, %v5313
  %v5315 = vpop.f32.mrb[0].mxu0
  %5316 = vmatprep.mubr.f32.mxu0 0.0
  %5317 = vmatmul.mubr.f32.gmra.mrb[0].mxu0 %v5185
  %v5318 = vpop.f32.mrb[0].mxu0
  %v5319 = vadd.f32 0.0, %v5318
  %v5320 = vpop.f32.mrb[0].mxu0
  %5321 = vmatprep.mubr.f32.mxu0 0.0
  %5322 = vmatmul.mubr.f32.gmra.mrb[0].mxu0 %v5188
  %v5323 = vpop.f32.mrb[0].mxu0
  %v5324 = vadd.f32 0.0, %v5323
  %v5325 = vpop.f32.mrb[0].mxu0
  %5326 = vmatprep.mubr.f32.mxu0 0.0
  %5327 = vmatmul.mubr.f32.gmra.mrb[0].mxu0 %v5191
  %v5328 = vpop.f32.mrb[0].mxu0
  %v5329 = vadd.f32 0.0, %v5328
  %v5330 = vpop.f32.mrb[0].mxu0
  %5331 = vdwg.mxu0
  %v5332 = vadd.f32 %v5114, %v5260
  %v5333 = vadd.f32 %v5115, %v5265
  %v5334 = vadd.f32 %v5116, %v5270
  %v5335 = vadd.f32 %v5117, %v5275
  %v5336 = vadd.f32 %v5118, %v5280
  %v5337 = vadd.f32 %v5119, %v5285
  %v5338 = vadd.f32 %v5120, %v5290
  %v5339 = vadd.f32 %v5121, %v5299
  %v5340 = vadd.f32 %v5122, %v5304
  %v5341 = vadd.f32 %v5123, %v5309
  %v5342 = vadd.f32 %v5124, %v5314
  %v5343 = vadd.f32 %v5125, %v5319
  %v5344 = vadd.f32 %v5126, %v5324
  %v5345 = vadd.f32 %v5127, %v5329
  %v5346 = vld [vmem:[#allocation2 + $0x9] sm:$0xff]
  %v5347 = vld [vmem:[#allocation2 + $0x11] sm:$0xff]
  %v5348 = vld [vmem:[#allocation2 + $0x19] sm:$0xff]
  %v5349 = vld [vmem:[#allocation2 + $0x21] sm:$0xff]
  %v5350 = vld [vmem:[#allocation2 + $0x29] sm:$0xff]
  %v5351 = vld [vmem:[#allocation2 + $0x31] sm:$0xff]
  %v5352 = vld [vmem:[#allocation2 + $0x39] sm:$0xff]
  %v5353 = vld [vmem:[#allocation2 + $0x41] sm:$0xff]
  %v5354 = vld [vmem:[#allocation2 + $0x49] sm:$0xff]
  %v5355 = vld [vmem:[#allocation2 + $0x51] sm:$0xff]
  %v5356 = vld [vmem:[#allocation2 + $0x59] sm:$0xff]
  %v5357 = vld [vmem:[#allocation2 + $0x61] sm:$0xff]
  %v5358 = vld [vmem:[#allocation2 + $0x69] sm:$0xff]
  %v5359 = vld [vmem:[#allocation2 + $0x71] sm:$0xff]
  %v5360 = vld [vmem:[#allocation2 + $0x79] sm:$0xff]
  %s5361 = scalar_lea.vmem %s4, 256
  %v5362 = vld [vmem:[%s5361] sm:$0xff]
  %v5363 = vld [vmem:[%s5361 + $0x8] sm:$0xff]
  %v5364 = vld [vmem:[%s5361 + $0x10] sm:$0xff]
  %v5365 = vld [vmem:[%s5361 + $0x18] sm:$0xff]
  %v5367 = vsel %vm3500, %v5346, 0
  %v5370 = vsel %vm3500, %v5347, 0
  %v5373 = vsel %vm3500, %v5348, 0
  %v5376 = vsel %vm3500, %v5349, 0
  %v5379 = vsel %vm3500, %v5350, 0
  %v5382 = vsel %vm3500, %v5351, 0
  %v5385 = vsel %vm3500, %v5352, 0
  %v5388 = vsel %vm3500, %v5353, 0
  %v5391 = vsel %vm3500, %v5354, 0
  %v5394 = vsel %vm3500, %v5355, 0
  %v5397 = vsel %vm3500, %v5356, 0
  %v5400 = vsel %vm3500, %v5357, 0
  %v5403 = vsel %vm3500, %v5358, 0
  %v5406 = vsel %vm3500, %v5359, 0
  %v5409 = vsel %vm3500, %v5360, 0
  %5411 = vmatprep.subr.mxu0 0.0
  %5412 = vmatpush1.msra.mxu0 %v5362
  %5413 = vmatprep.subr.mxu0 0.0
  %5414 = vmatpush1.msra.mxu0 %v5363
  %5415 = vmatprep.subr.mxu0 0.0
  %5416 = vmatpush1.msra.mxu0 %v5364
  %5417 = vmatprep.subr.mxu0 0.0
  %5418 = vmatpush1.msra.mxu0 %v5365
  %5419 = vmatprep.subr.mxu0 0.0
  %5420 = vmatpush1.msra.mxu0 0.0
  %5421 = vmatprep.subr.mxu0 0.0
  %5422 = vmatpush1.msra.mxu0 0.0
  %5423 = vmatprep.subr.mxu0 0.0
  %5424 = vmatpush1.msra.mxu0 0.0
  %5425 = vmatprep.subr.mxu0 0.0
  %5426 = vmatpush1.msra.mxu0 0.0
  %5427 = vmatprep.subr.mxu0 0.0
  %5428 = vmatpush1.msra.mxu0 0.0
  %5429 = vmatprep.subr.mxu0 0.0
  %5430 = vmatpush1.msra.mxu0 0.0
  %5431 = vmatprep.subr.mxu0 0.0
  %5432 = vmatpush1.msra.mxu0 0.0
  %5433 = vmatprep.subr.mxu0 0.0
  %5434 = vmatpush1.msra.mxu0 0.0
  %5435 = vmatprep.subr.mxu0 0.0
  %5436 = vmatpush1.msra.mxu0 0.0
  %5437 = vmatprep.subr.mxu0 0.0
  %5438 = vmatpush1.msra.mxu0 0.0
  %5439 = vmatprep.subr.mxu0 0.0
  %5440 = vmatpush1.msra.mxu0 0.0
  %5441 = vmatprep.subr.mxu0 0.0
  %5442 = vmatpush1.msra.mxu0 0.0
  %5443 = vmatprep.subr.mxu0 0.0
  %5444 = vmatpush1.msra.mxu0 0.0
  %5445 = vmatprep.subr.mxu0 0.0
  %5446 = vmatpush1.msra.mxu0 0.0
  %5447 = vmatprep.subr.mxu0 0.0
  %5448 = vmatpush1.msra.mxu0 0.0
  %5449 = vmatprep.subr.mxu0 0.0
  %5450 = vmatpush1.msra.mxu0 0.0
  %5451 = vmatprep.subr.mxu0 0.0
  %5452 = vmatpush1.msra.mxu0 0.0
  %5453 = vmatprep.subr.mxu0 0.0
  %5454 = vmatpush1.msra.mxu0 0.0
  %5455 = vmatprep.subr.mxu0 0.0
  %5456 = vmatpush1.msra.mxu0 0.0
  %5457 = vmatprep.subr.mxu0 0.0
  %5458 = vmatpush1.msra.mxu0 0.0
  %5459 = vmatprep.subr.mxu0 0.0
  %5460 = vmatpush1.msra.mxu0 0.0
  %5461 = vmatprep.subr.mxu0 0.0
  %5462 = vmatpush1.msra.mxu0 0.0
  %5463 = vmatprep.subr.mxu0 0.0
  %5464 = vmatpush1.msra.mxu0 0.0
  %5465 = vmatprep.subr.mxu0 0.0
  %5466 = vmatpush1.msra.mxu0 0.0
  %5467 = vmatprep.subr.mxu0 0.0
  %5468 = vmatpush1.msra.mxu0 0.0
  %5469 = vmatprep.subr.mxu0 0.0
  %5470 = vmatpush1.msra.mxu0 0.0
  %5471 = vmatprep.subr.mxu0 0.0
  %5472 = vmatpush1.msra.mxu0 0.0
  %5473 = vmatprep.subr.mxu0 0.0
  %5474 = vmatpush1.msra.mxu0 0.0
  %5475 = vmatprep.mubr.f32.mxu0 0.0
  %5476 = vmatmul.mubr.f32.gmra.mrb[0].mxu0 %v5367
  %v5477 = vpop.f32.mrb[0].mxu0
  %v5478 = vadd.f32 0.0, %v5477
  %v5479 = vpop.f32.mrb[0].mxu0
  %5480 = vmatprep.mubr.f32.mxu0 0.0
  %5481 = vmatmul.mubr.f32.gmra.mrb[0].mxu0 %v5370
  %v5482 = vpop.f32.mrb[0].mxu0
  %v5483 = vadd.f32 0.0, %v5482
  %v5484 = vpop.f32.mrb[0].mxu0
  %5485 = vmatprep.mubr.f32.mxu0 0.0
  %5486 = vmatmul.mubr.f32.gmra.mrb[0].mxu0 %v5373
  %v5487 = vpop.f32.mrb[0].mxu0
  %v5488 = vadd.f32 0.0, %v5487
  %v5489 = vpop.f32.mrb[0].mxu0
  %5490 = vmatprep.mubr.f32.mxu0 0.0
  %5491 = vmatmul.mubr.f32.gmra.mrb[0].mxu0 %v5376
  %v5492 = vpop.f32.mrb[0].mxu0
  %v5493 = vadd.f32 0.0, %v5492
  %v5494 = vpop.f32.mrb[0].mxu0
  %5495 = vmatprep.mubr.f32.mxu0 0.0
  %5496 = vmatmul.mubr.f32.gmra.mrb[0].mxu0 %v5379
  %v5497 = vpop.f32.mrb[0].mxu0
  %v5498 = vadd.f32 0.0, %v5497
  %v5499 = vpop.f32.mrb[0].mxu0
  %5500 = vmatprep.mubr.f32.mxu0 0.0
  %5501 = vmatmul.mubr.f32.gmra.mrb[0].mxu0 %v5382
  %v5502 = vpop.f32.mrb[0].mxu0
  %v5503 = vadd.f32 0.0, %v5502
  %v5504 = vpop.f32.mrb[0].mxu0
  %5505 = vmatprep.mubr.f32.mxu0 0.0
  %5506 = vmatmul.mubr.f32.gmra.mrb[0].mxu0 %v5385
  %v5507 = vpop.f32.mrb[0].mxu0
  %v5508 = vadd.f32 0.0, %v5507
  %v5509 = vpop.f32.mrb[0].mxu0
  %5510 = vmatprep.mubr.f32.mxu0 0.0
  %5511 = vmatmul.mubr.f32.gmra.mrb[0].mxu0 %v5388
  %v5512 = vpop.f32.mrb[0].mxu0
  %v5513 = vpop.f32.mrb[0].mxu0
  %5514 = vmatprep.mubr.f32.mxu0 0.0
  %5515 = vmatmul.mubr.f32.gmra.mrb[0].mxu0 %v5391
  %v5516 = vpop.f32.mrb[0].mxu0
  %v5517 = vadd.f32 0.0, %v5516
  %v5518 = vpop.f32.mrb[0].mxu0
  %5519 = vmatprep.mubr.f32.mxu0 0.0
  %5520 = vmatmul.mubr.f32.gmra.mrb[0].mxu0 %v5394
  %v5521 = vpop.f32.mrb[0].mxu0
  %v5522 = vadd.f32 0.0, %v5521
  %v5523 = vpop.f32.mrb[0].mxu0
  %5524 = vmatprep.mubr.f32.mxu0 0.0
  %5525 = vmatmul.mubr.f32.gmra.mrb[0].mxu0 %v5397
  %v5526 = vpop.f32.mrb[0].mxu0
  %v5527 = vadd.f32 0.0, %v5526
  %v5528 = vpop.f32.mrb[0].mxu0
  %5529 = vmatprep.mubr.f32.mxu0 0.0
  %5530 = vmatmul.mubr.f32.gmra.mrb[0].mxu0 %v5400
  %v5531 = vpop.f32.mrb[0].mxu0
  %v5532 = vadd.f32 0.0, %v5531
  %v5533 = vpop.f32.mrb[0].mxu0
  %5534 = vmatprep.mubr.f32.mxu0 0.0
  %5535 = vmatmul.mubr.f32.gmra.mrb[0].mxu0 %v5403
  %v5536 = vpop.f32.mrb[0].mxu0
  %v5537 = vadd.f32 0.0, %v5536
  %v5538 = vpop.f32.mrb[0].mxu0
  %5539 = vmatprep.mubr.f32.mxu0 0.0
  %5540 = vmatmul.mubr.f32.gmra.mrb[0].mxu0 %v5406
  %v5541 = vpop.f32.mrb[0].mxu0
  %v5542 = vadd.f32 0.0, %v5541
  %v5543 = vpop.f32.mrb[0].mxu0
  %5544 = vmatprep.mubr.f32.mxu0 0.0
  %5545 = vmatmul.mubr.f32.gmra.mrb[0].mxu0 %v5409
  %v5546 = vpop.f32.mrb[0].mxu0
  %v5547 = vadd.f32 0.0, %v5546
  %v5548 = vpop.f32.mrb[0].mxu0
  %5549 = vdwg.mxu0
  %v5550 = vadd.f32 %v5332, %v5478
  %v5551 = vadd.f32 %v5333, %v5483
  %v5552 = vadd.f32 %v5334, %v5488
  %v5553 = vadd.f32 %v5335, %v5493
  %v5554 = vadd.f32 %v5336, %v5498
  %v5555 = vadd.f32 %v5337, %v5503
  %v5556 = vadd.f32 %v5338, %v5508
  %v5557 = vadd.f32 %v5339, %v5517
  %v5558 = vadd.f32 %v5340, %v5522
  %v5559 = vadd.f32 %v5341, %v5527
  %v5560 = vadd.f32 %v5342, %v5532
  %v5561 = vadd.f32 %v5343, %v5537
  %v5562 = vadd.f32 %v5344, %v5542
  %v5563 = vadd.f32 %v5345, %v5547
  %v5565 = vlaneseq
  %v5566 = vshrl.u32 %v5565, 7
  %v5567 = vsub.s32 0, %v5566
  %v5568 = vrot.slane %v3630, %v5567
  %v5570 = vadd.f32 %v5550, %v5568
  %v5571 = vadd.f32 %v5551, %v5568
  %v5572 = vadd.f32 %v5552, %v5568
  %v5573 = vadd.f32 %v5553, %v5568
  %v5574 = vadd.f32 %v5554, %v5568
  %v5575 = vadd.f32 %v5555, %v5568
  %v5576 = vadd.f32 %v5556, %v5568
  %v5577 = vadd.f32 %v5557, %v5568
  %v5578 = vadd.f32 %v5558, %v5568
  %v5579 = vadd.f32 %v5559, %v5568
  %v5580 = vadd.f32 %v5560, %v5568
  %v5581 = vadd.f32 %v5561, %v5568
  %v5582 = vadd.f32 %v5562, %v5568
  %v5583 = vadd.f32 %v5563, %v5568
  %v5584 = vmax.f32 %v5570, 0.0
  %v5585 = vmax.f32 %v5571, 0.0
  %v5586 = vmax.f32 %v5572, 0.0
  %v5587 = vmax.f32 %v5573, 0.0
  %v5588 = vmax.f32 %v5574, 0.0
  %v5589 = vmax.f32 %v5575, 0.0
  %v5590 = vmax.f32 %v5576, 0.0
  %v5591 = vmax.f32 %v5577, 0.0
  %v5592 = vmax.f32 %v5578, 0.0
  %v5593 = vmax.f32 %v5579, 0.0
  %v5594 = vmax.f32 %v5580, 0.0
  %v5595 = vmax.f32 %v5581, 0.0
  %v5596 = vmax.f32 %v5582, 0.0
  %v5597 = vmax.f32 %v5583, 0.0
  %5598 = vmatprep.subr.mxu0 0.0
  %5599 = vmatpush1.msra.mxu0 %v3666
  %5600 = vmatprep.subr.mxu0 0.0
  %5601 = vmatpush1.msra.mxu0 %v3667
  %5602 = vmatprep.subr.mxu0 0.0
  %5603 = vmatpush1.msra.mxu0 %v3668
  %5604 = vmatprep.subr.mxu0 0.0
  %5605 = vmatpush1.msra.mxu0 %v3669
  %5606 = vmatprep.subr.mxu0 0.0
  %5607 = vmatpush1.msra.mxu0 0.0
  %5608 = vmatprep.subr.mxu0 0.0
  %5609 = vmatpush1.msra.mxu0 0.0
  %5610 = vmatprep.subr.mxu0 0.0
  %5611 = vmatpush1.msra.mxu0 0.0
  %5612 = vmatprep.subr.mxu0 0.0
  %5613 = vmatpush1.msra.mxu0 0.0
  %5614 = vmatprep.subr.mxu0 0.0
  %5615 = vmatpush1.msra.mxu0 0.0
  %5616 = vmatprep.subr.mxu0 0.0
  %5617 = vmatpush1.msra.mxu0 0.0
  %5618 = vmatprep.subr.mxu0 0.0
  %5619 = vmatpush1.msra.mxu0 0.0
  %5620 = vmatprep.subr.mxu0 0.0
  %5621 = vmatpush1.msra.mxu0 0.0
  %5622 = vmatprep.subr.mxu0 0.0
  %5623 = vmatpush1.msra.mxu0 0.0
  %5624 = vmatprep.subr.mxu0 0.0
  %5625 = vmatpush1.msra.mxu0 0.0
  %5626 = vmatprep.subr.mxu0 0.0
  %5627 = vmatpush1.msra.mxu0 0.0
  %5628 = vmatprep.subr.mxu0 0.0
  %5629 = vmatpush1.msra.mxu0 0.0
  %5630 = vmatprep.subr.mxu0 0.0
  %5631 = vmatpush1.msra.mxu0 0.0
  %5632 = vmatprep.subr.mxu0 0.0
  %5633 = vmatpush1.msra.mxu0 0.0
  %5634 = vmatprep.subr.mxu0 0.0
  %5635 = vmatpush1.msra.mxu0 0.0
  %5636 = vmatprep.subr.mxu0 0.0
  %5637 = vmatpush1.msra.mxu0 0.0
  %5638 = vmatprep.subr.mxu0 0.0
  %5639 = vmatpush1.msra.mxu0 0.0
  %5640 = vmatprep.subr.mxu0 0.0
  %5641 = vmatpush1.msra.mxu0 0.0
  %5642 = vmatprep.subr.mxu0 0.0
  %5643 = vmatpush1.msra.mxu0 0.0
  %5644 = vmatprep.subr.mxu0 0.0
  %5645 = vmatpush1.msra.mxu0 0.0
  %5646 = vmatprep.subr.mxu0 0.0
  %5647 = vmatpush1.msra.mxu0 0.0
  %5648 = vmatprep.subr.mxu0 0.0
  %5649 = vmatpush1.msra.mxu0 0.0
  %5650 = vmatprep.subr.mxu0 0.0
  %5651 = vmatpush1.msra.mxu0 0.0
  %5652 = vmatprep.subr.mxu0 0.0
  %5653 = vmatpush1.msra.mxu0 0.0
  %5654 = vmatprep.subr.mxu0 0.0
  %5655 = vmatpush1.msra.mxu0 0.0
  %5656 = vmatprep.subr.mxu0 0.0
  %5657 = vmatpush1.msra.mxu0 0.0
  %5658 = vmatprep.subr.mxu0 0.0
  %5659 = vmatpush1.msra.mxu0 0.0
  %5660 = vmatprep.subr.mxu0 0.0
  %5661 = vmatpush1.msra.mxu0 0.0
  %5662 = vmatprep.mubr.f32.mxu0 0.0
  %5663 = vmatmul.mubr.f32.gmra.mrb[0].mxu0 %v4059
  %v5664 = vpop.f32.mrb[0].mxu0
  %v5665 = vadd.f32 0.0, %v5664
  %v5666 = vpop.f32.mrb[0].mxu0
  %5667 = vmatprep.mubr.f32.mxu0 0.0
  %5668 = vmatmul.mubr.f32.gmra.mrb[0].mxu0 %v4062
  %v5669 = vpop.f32.mrb[0].mxu0
  %v5670 = vadd.f32 0.0, %v5669
  %v5671 = vpop.f32.mrb[0].mxu0
  %5672 = vmatprep.mubr.f32.mxu0 0.0
  %5673 = vmatmul.mubr.f32.gmra.mrb[0].mxu0 %v4065
  %v5674 = vpop.f32.mrb[0].mxu0
  %v5675 = vadd.f32 0.0, %v5674
  %v5676 = vpop.f32.mrb[0].mxu0
  %5677 = vmatprep.mubr.f32.mxu0 0.0
  %5678 = vmatmul.mubr.f32.gmra.mrb[0].mxu0 %v4068
  %v5679 = vpop.f32.mrb[0].mxu0
  %v5680 = vadd.f32 0.0, %v5679
  %v5681 = vpop.f32.mrb[0].mxu0
  %5682 = vmatprep.mubr.f32.mxu0 0.0
  %5683 = vmatmul.mubr.f32.gmra.mrb[0].mxu0 %v4071
  %v5684 = vpop.f32.mrb[0].mxu0
  %v5685 = vadd.f32 0.0, %v5684
  %v5686 = vpop.f32.mrb[0].mxu0
  %5687 = vmatprep.mubr.f32.mxu0 0.0
  %5688 = vmatmul.mubr.f32.gmra.mrb[0].mxu0 %v4074
  %v5689 = vpop.f32.mrb[0].mxu0
  %v5690 = vadd.f32 0.0, %v5689
  %v5691 = vpop.f32.mrb[0].mxu0
  %5692 = vmatprep.mubr.f32.mxu0 0.0
  %5693 = vmatmul.mubr.f32.gmra.mrb[0].mxu0 %v4077
  %v5694 = vpop.f32.mrb[0].mxu0
  %v5695 = vadd.f32 0.0, %v5694
  %v5696 = vpop.f32.mrb[0].mxu0
  %5697 = vmatprep.mubr.f32.mxu0 0.0
  %5698 = vmatmul.mubr.f32.gmra.mrb[0].mxu0 %v4080
  %v5699 = vpop.f32.mrb[0].mxu0
  %v5700 = vpop.f32.mrb[0].mxu0
  %5701 = vmatprep.mubr.f32.mxu0 0.0
  %5702 = vmatmul.mubr.f32.gmra.mrb[0].mxu0 %v4083
  %v5703 = vpop.f32.mrb[0].mxu0
  %v5704 = vadd.f32 0.0, %v5703
  %v5705 = vpop.f32.mrb[0].mxu0
  %5706 = vmatprep.mubr.f32.mxu0 0.0
  %5707 = vmatmul.mubr.f32.gmra.mrb[0].mxu0 %v4086
  %v5708 = vpop.f32.mrb[0].mxu0
  %v5709 = vadd.f32 0.0, %v5708
  %v5710 = vpop.f32.mrb[0].mxu0
  %5711 = vmatprep.mubr.f32.mxu0 0.0
  %5712 = vmatmul.mubr.f32.gmra.mrb[0].mxu0 %v4089
  %v5713 = vpop.f32.mrb[0].mxu0
  %v5714 = vadd.f32 0.0, %v5713
  %v5715 = vpop.f32.mrb[0].mxu0
  %5716 = vmatprep.mubr.f32.mxu0 0.0
  %5717 = vmatmul.mubr.f32.gmra.mrb[0].mxu0 %v4092
  %v5718 = vpop.f32.mrb[0].mxu0
  %v5719 = vadd.f32 0.0, %v5718
  %v5720 = vpop.f32.mrb[0].mxu0
  %5721 = vmatprep.mubr.f32.mxu0 0.0
  %5722 = vmatmul.mubr.f32.gmra.mrb[0].mxu0 %v4095
  %v5723 = vpop.f32.mrb[0].mxu0
  %v5724 = vadd.f32 0.0, %v5723
  %v5725 = vpop.f32.mrb[0].mxu0
  %5726 = vmatprep.mubr.f32.mxu0 0.0
  %5727 = vmatmul.mubr.f32.gmra.mrb[0].mxu0 %v4098
  %v5728 = vpop.f32.mrb[0].mxu0
  %v5729 = vadd.f32 0.0, %v5728
  %v5730 = vpop.f32.mrb[0].mxu0
  %5731 = vmatprep.mubr.f32.mxu0 0.0
  %5732 = vmatmul.mubr.f32.gmra.mrb[0].mxu0 %v4101
  %v5733 = vpop.f32.mrb[0].mxu0
  %v5734 = vadd.f32 0.0, %v5733
  %v5735 = vpop.f32.mrb[0].mxu0
  %5736 = vdwg.mxu0
  %5737 = vmatprep.subr.mxu0 0.0
  %5738 = vmatpush1.msra.mxu0 %v3646
  %5739 = vmatprep.subr.mxu0 0.0
  %5740 = vmatpush1.msra.mxu0 %v3647
  %5741 = vmatprep.subr.mxu0 0.0
  %5742 = vmatpush1.msra.mxu0 %v3648
  %5743 = vmatprep.subr.mxu0 0.0
  %5744 = vmatpush1.msra.mxu0 %v3649
  %5745 = vmatprep.subr.mxu0 0.0
  %5746 = vmatpush1.msra.mxu0 0.0
  %5747 = vmatprep.subr.mxu0 0.0
  %5748 = vmatpush1.msra.mxu0 0.0
  %5749 = vmatprep.subr.mxu0 0.0
  %5750 = vmatpush1.msra.mxu0 0.0
  %5751 = vmatprep.subr.mxu0 0.0
  %5752 = vmatpush1.msra.mxu0 0.0
  %5753 = vmatprep.subr.mxu0 0.0
  %5754 = vmatpush1.msra.mxu0 0.0
  %5755 = vmatprep.subr.mxu0 0.0
  %5756 = vmatpush1.msra.mxu0 0.0
  %5757 = vmatprep.subr.mxu0 0.0
  %5758 = vmatpush1.msra.mxu0 0.0
  %5759 = vmatprep.subr.mxu0 0.0
  %5760 = vmatpush1.msra.mxu0 0.0
  %5761 = vmatprep.subr.mxu0 0.0
  %5762 = vmatpush1.msra.mxu0 0.0
  %5763 = vmatprep.subr.mxu0 0.0
  %5764 = vmatpush1.msra.mxu0 0.0
  %5765 = vmatprep.subr.mxu0 0.0
  %5766 = vmatpush1.msra.mxu0 0.0
  %5767 = vmatprep.subr.mxu0 0.0
  %5768 = vmatpush1.msra.mxu0 0.0
  %5769 = vmatprep.subr.mxu0 0.0
  %5770 = vmatpush1.msra.mxu0 0.0
  %5771 = vmatprep.subr.mxu0 0.0
  %5772 = vmatpush1.msra.mxu0 0.0
  %5773 = vmatprep.subr.mxu0 0.0
  %5774 = vmatpush1.msra.mxu0 0.0
  %5775 = vmatprep.subr.mxu0 0.0
  %5776 = vmatpush1.msra.mxu0 0.0
  %5777 = vmatprep.subr.mxu0 0.0
  %5778 = vmatpush1.msra.mxu0 0.0
  %5779 = vmatprep.subr.mxu0 0.0
  %5780 = vmatpush1.msra.mxu0 0.0
  %5781 = vmatprep.subr.mxu0 0.0
  %5782 = vmatpush1.msra.mxu0 0.0
  %5783 = vmatprep.subr.mxu0 0.0
  %5784 = vmatpush1.msra.mxu0 0.0
  %5785 = vmatprep.subr.mxu0 0.0
  %5786 = vmatpush1.msra.mxu0 0.0
  %5787 = vmatprep.subr.mxu0 0.0
  %5788 = vmatpush1.msra.mxu0 0.0
  %5789 = vmatprep.subr.mxu0 0.0
  %5790 = vmatpush1.msra.mxu0 0.0
  %5791 = vmatprep.subr.mxu0 0.0
  %5792 = vmatpush1.msra.mxu0 0.0
  %5793 = vmatprep.subr.mxu0 0.0
  %5794 = vmatpush1.msra.mxu0 0.0
  %5795 = vmatprep.subr.mxu0 0.0
  %5796 = vmatpush1.msra.mxu0 0.0
  %5797 = vmatprep.subr.mxu0 0.0
  %5798 = vmatpush1.msra.mxu0 0.0
  %5799 = vmatprep.subr.mxu0 0.0
  %5800 = vmatpush1.msra.mxu0 0.0
  %5801 = vmatprep.mubr.f32.mxu0 0.0
  %5802 = vmatmul.mubr.f32.gmra.mrb[0].mxu0 %v3671
  %v5803 = vpop.f32.mrb[0].mxu0
  %v5804 = vadd.f32 %v5665, %v5803
  %v5805 = vpop.f32.mrb[0].mxu0
  %5806 = vmatprep.mubr.f32.mxu0 0.0
  %5807 = vmatmul.mubr.f32.gmra.mrb[0].mxu0 %v3674
  %v5808 = vpop.f32.mrb[0].mxu0
  %v5809 = vadd.f32 %v5670, %v5808
  %v5810 = vpop.f32.mrb[0].mxu0
  %5811 = vmatprep.mubr.f32.mxu0 0.0
  %5812 = vmatmul.mubr.f32.gmra.mrb[0].mxu0 %v3677
  %v5813 = vpop.f32.mrb[0].mxu0
  %v5814 = vadd.f32 %v5675, %v5813
  %v5815 = vpop.f32.mrb[0].mxu0
  %5816 = vmatprep.mubr.f32.mxu0 0.0
  %5817 = vmatmul.mubr.f32.gmra.mrb[0].mxu0 %v3680
  %v5818 = vpop.f32.mrb[0].mxu0
  %v5819 = vadd.f32 %v5680, %v5818
  %v5820 = vpop.f32.mrb[0].mxu0
  %5821 = vmatprep.mubr.f32.mxu0 0.0
  %5822 = vmatmul.mubr.f32.gmra.mrb[0].mxu0 %v3683
  %v5823 = vpop.f32.mrb[0].mxu0
  %v5824 = vadd.f32 %v5685, %v5823
  %v5825 = vpop.f32.mrb[0].mxu0
  %5826 = vmatprep.mubr.f32.mxu0 0.0
  %5827 = vmatmul.mubr.f32.gmra.mrb[0].mxu0 %v3686
  %v5828 = vpop.f32.mrb[0].mxu0
  %v5829 = vadd.f32 %v5690, %v5828
  %v5830 = vpop.f32.mrb[0].mxu0
  %5831 = vmatprep.mubr.f32.mxu0 0.0
  %5832 = vmatmul.mubr.f32.gmra.mrb[0].mxu0 %v3689
  %v5833 = vpop.f32.mrb[0].mxu0
  %v5834 = vadd.f32 %v5695, %v5833
  %v5835 = vpop.f32.mrb[0].mxu0
  %5836 = vmatprep.mubr.f32.mxu0 0.0
  %5837 = vmatmul.mubr.f32.gmra.mrb[0].mxu0 %v3692
  %v5838 = vpop.f32.mrb[0].mxu0
  %v5839 = vpop.f32.mrb[0].mxu0
  %5840 = vmatprep.mubr.f32.mxu0 0.0
  %5841 = vmatmul.mubr.f32.gmra.mrb[0].mxu0 %v3695
  %v5842 = vpop.f32.mrb[0].mxu0
  %v5843 = vadd.f32 %v5704, %v5842
  %v5844 = vpop.f32.mrb[0].mxu0
  %5845 = vmatprep.mubr.f32.mxu0 0.0
  %5846 = vmatmul.mubr.f32.gmra.mrb[0].mxu0 %v3698
  %v5847 = vpop.f32.mrb[0].mxu0
  %v5848 = vadd.f32 %v5709, %v5847
  %v5849 = vpop.f32.mrb[0].mxu0
  %5850 = vmatprep.mubr.f32.mxu0 0.0
  %5851 = vmatmul.mubr.f32.gmra.mrb[0].mxu0 %v3701
  %v5852 = vpop.f32.mrb[0].mxu0
  %v5853 = vadd.f32 %v5714, %v5852
  %v5854 = vpop.f32.mrb[0].mxu0
  %5855 = vmatprep.mubr.f32.mxu0 0.0
  %5856 = vmatmul.mubr.f32.gmra.mrb[0].mxu0 %v3704
  %v5857 = vpop.f32.mrb[0].mxu0
  %v5858 = vadd.f32 %v5719, %v5857
  %v5859 = vpop.f32.mrb[0].mxu0
  %5860 = vmatprep.mubr.f32.mxu0 0.0
  %5861 = vmatmul.mubr.f32.gmra.mrb[0].mxu0 %v3707
  %v5862 = vpop.f32.mrb[0].mxu0
  %v5863 = vadd.f32 %v5724, %v5862
  %v5864 = vpop.f32.mrb[0].mxu0
  %5865 = vmatprep.mubr.f32.mxu0 0.0
  %5866 = vmatmul.mubr.f32.gmra.mrb[0].mxu0 %v3710
  %v5867 = vpop.f32.mrb[0].mxu0
  %v5868 = vadd.f32 %v5729, %v5867
  %v5869 = vpop.f32.mrb[0].mxu0
  %5870 = vmatprep.mubr.f32.mxu0 0.0
  %5871 = vmatmul.mubr.f32.gmra.mrb[0].mxu0 %v3713
  %v5872 = vpop.f32.mrb[0].mxu0
  %v5873 = vadd.f32 %v5734, %v5872
  %v5874 = vpop.f32.mrb[0].mxu0
  %5875 = vdwg.mxu0
  %v5876 = vld [vmem:[#allocation2 + $0x81] sm:$0xff]
  %v5877 = vld [vmem:[#allocation2 + $0x89] sm:$0xff]
  %v5878 = vld [vmem:[#allocation2 + $0x91] sm:$0xff]
  %v5879 = vld [vmem:[#allocation2 + $0x99] sm:$0xff]
  %v5880 = vld [vmem:[#allocation2 + $0xa1] sm:$0xff]
  %v5881 = vld [vmem:[#allocation2 + $0xa9] sm:$0xff]
  %v5882 = vld [vmem:[#allocation2 + $0xb1] sm:$0xff]
  %v5883 = vld [vmem:[#allocation2 + $0xb9] sm:$0xff]
  %v5884 = vld [vmem:[#allocation2 + $0xc1] sm:$0xff]
  %v5885 = vld [vmem:[#allocation2 + $0xc9] sm:$0xff]
  %v5886 = vld [vmem:[#allocation2 + $0xd1] sm:$0xff]
  %v5887 = vld [vmem:[#allocation2 + $0xd9] sm:$0xff]
  %v5888 = vld [vmem:[#allocation2 + $0xe1] sm:$0xff]
  %v5889 = vld [vmem:[#allocation2 + $0xe9] sm:$0xff]
  %v5890 = vld [vmem:[#allocation2 + $0xf1] sm:$0xff]
  %v5892 = vsel %vm3500, %v5876, 0
  %v5895 = vsel %vm3500, %v5877, 0
  %v5898 = vsel %vm3500, %v5878, 0
  %v5901 = vsel %vm3500, %v5879, 0
  %v5904 = vsel %vm3500, %v5880, 0
  %v5907 = vsel %vm3500, %v5881, 0
  %v5910 = vsel %vm3500, %v5882, 0
  %v5913 = vsel %vm3500, %v5883, 0
  %v5916 = vsel %vm3500, %v5884, 0
  %v5919 = vsel %vm3500, %v5885, 0
  %v5922 = vsel %vm3500, %v5886, 0
  %v5925 = vsel %vm3500, %v5887, 0
  %v5928 = vsel %vm3500, %v5888, 0
  %v5931 = vsel %vm3500, %v5889, 0
  %v5934 = vsel %vm3500, %v5890, 0
  %5936 = vmatprep.subr.mxu0 0.0
  %5937 = vmatpush1.msra.mxu0 %v4054
  %5938 = vmatprep.subr.mxu0 0.0
  %5939 = vmatpush1.msra.mxu0 %v4055
  %5940 = vmatprep.subr.mxu0 0.0
  %5941 = vmatpush1.msra.mxu0 %v4056
  %5942 = vmatprep.subr.mxu0 0.0
  %5943 = vmatpush1.msra.mxu0 %v4057
  %5944 = vmatprep.subr.mxu0 0.0
  %5945 = vmatpush1.msra.mxu0 0.0
  %5946 = vmatprep.subr.mxu0 0.0
  %5947 = vmatpush1.msra.mxu0 0.0
  %5948 = vmatprep.subr.mxu0 0.0
  %5949 = vmatpush1.msra.mxu0 0.0
  %5950 = vmatprep.subr.mxu0 0.0
  %5951 = vmatpush1.msra.mxu0 0.0
  %5952 = vmatprep.subr.mxu0 0.0
  %5953 = vmatpush1.msra.mxu0 0.0
  %5954 = vmatprep.subr.mxu0 0.0
  %5955 = vmatpush1.msra.mxu0 0.0
  %5956 = vmatprep.subr.mxu0 0.0
  %5957 = vmatpush1.msra.mxu0 0.0
  %5958 = vmatprep.subr.mxu0 0.0
  %5959 = vmatpush1.msra.mxu0 0.0
  %5960 = vmatprep.subr.mxu0 0.0
  %5961 = vmatpush1.msra.mxu0 0.0
  %5962 = vmatprep.subr.mxu0 0.0
  %5963 = vmatpush1.msra.mxu0 0.0
  %5964 = vmatprep.subr.mxu0 0.0
  %5965 = vmatpush1.msra.mxu0 0.0
  %5966 = vmatprep.subr.mxu0 0.0
  %5967 = vmatpush1.msra.mxu0 0.0
  %5968 = vmatprep.subr.mxu0 0.0
  %5969 = vmatpush1.msra.mxu0 0.0
  %5970 = vmatprep.subr.mxu0 0.0
  %5971 = vmatpush1.msra.mxu0 0.0
  %5972 = vmatprep.subr.mxu0 0.0
  %5973 = vmatpush1.msra.mxu0 0.0
  %5974 = vmatprep.subr.mxu0 0.0
  %5975 = vmatpush1.msra.mxu0 0.0
  %5976 = vmatprep.subr.mxu0 0.0
  %5977 = vmatpush1.msra.mxu0 0.0
  %5978 = vmatprep.subr.mxu0 0.0
  %5979 = vmatpush1.msra.mxu0 0.0
  %5980 = vmatprep.subr.mxu0 0.0
  %5981 = vmatpush1.msra.mxu0 0.0
  %5982 = vmatprep.subr.mxu0 0.0
  %5983 = vmatpush1.msra.mxu0 0.0
  %5984 = vmatprep.subr.mxu0 0.0
  %5985 = vmatpush1.msra.mxu0 0.0
  %5986 = vmatprep.subr.mxu0 0.0
  %5987 = vmatpush1.msra.mxu0 0.0
  %5988 = vmatprep.subr.mxu0 0.0
  %5989 = vmatpush1.msra.mxu0 0.0
  %5990 = vmatprep.subr.mxu0 0.0
  %5991 = vmatpush1.msra.mxu0 0.0
  %5992 = vmatprep.subr.mxu0 0.0
  %5993 = vmatpush1.msra.mxu0 0.0
  %5994 = vmatprep.subr.mxu0 0.0
  %5995 = vmatpush1.msra.mxu0 0.0
  %5996 = vmatprep.subr.mxu0 0.0
  %5997 = vmatpush1.msra.mxu0 0.0
  %5998 = vmatprep.subr.mxu0 0.0
  %5999 = vmatpush1.msra.mxu0 0.0
  %6000 = vmatprep.mubr.f32.mxu0 0.0
  %6001 = vmatmul.mubr.f32.gmra.mrb[0].mxu0 %v5892
  %v6002 = vpop.f32.mrb[0].mxu0
  %v6003 = vadd.f32 0.0, %v6002
  %v6004 = vpop.f32.mrb[0].mxu0
  %6005 = vmatprep.mubr.f32.mxu0 0.0
  %6006 = vmatmul.mubr.f32.gmra.mrb[0].mxu0 %v5895
  %v6007 = vpop.f32.mrb[0].mxu0
  %v6008 = vadd.f32 0.0, %v6007
  %v6009 = vpop.f32.mrb[0].mxu0
  %6010 = vmatprep.mubr.f32.mxu0 0.0
  %6011 = vmatmul.mubr.f32.gmra.mrb[0].mxu0 %v5898
  %v6012 = vpop.f32.mrb[0].mxu0
  %v6013 = vadd.f32 0.0, %v6012
  %v6014 = vpop.f32.mrb[0].mxu0
  %6015 = vmatprep.mubr.f32.mxu0 0.0
  %6016 = vmatmul.mubr.f32.gmra.mrb[0].mxu0 %v5901
  %v6017 = vpop.f32.mrb[0].mxu0
  %v6018 = vadd.f32 0.0, %v6017
  %v6019 = vpop.f32.mrb[0].mxu0
  %6020 = vmatprep.mubr.f32.mxu0 0.0
  %6021 = vmatmul.mubr.f32.gmra.mrb[0].mxu0 %v5904
  %v6022 = vpop.f32.mrb[0].mxu0
  %v6023 = vadd.f32 0.0, %v6022
  %v6024 = vpop.f32.mrb[0].mxu0
  %6025 = vmatprep.mubr.f32.mxu0 0.0
  %6026 = vmatmul.mubr.f32.gmra.mrb[0].mxu0 %v5907
  %v6027 = vpop.f32.mrb[0].mxu0
  %v6028 = vadd.f32 0.0, %v6027
  %v6029 = vpop.f32.mrb[0].mxu0
  %6030 = vmatprep.mubr.f32.mxu0 0.0
  %6031 = vmatmul.mubr.f32.gmra.mrb[0].mxu0 %v5910
  %v6032 = vpop.f32.mrb[0].mxu0
  %v6033 = vadd.f32 0.0, %v6032
  %v6034 = vpop.f32.mrb[0].mxu0
  %6035 = vmatprep.mubr.f32.mxu0 0.0
  %6036 = vmatmul.mubr.f32.gmra.mrb[0].mxu0 %v5913
  %v6037 = vpop.f32.mrb[0].mxu0
  %v6038 = vpop.f32.mrb[0].mxu0
  %6039 = vmatprep.mubr.f32.mxu0 0.0
  %6040 = vmatmul.mubr.f32.gmra.mrb[0].mxu0 %v5916
  %v6041 = vpop.f32.mrb[0].mxu0
  %v6042 = vadd.f32 0.0, %v6041
  %v6043 = vpop.f32.mrb[0].mxu0
  %6044 = vmatprep.mubr.f32.mxu0 0.0
  %6045 = vmatmul.mubr.f32.gmra.mrb[0].mxu0 %v5919
  %v6046 = vpop.f32.mrb[0].mxu0
  %v6047 = vadd.f32 0.0, %v6046
  %v6048 = vpop.f32.mrb[0].mxu0
  %6049 = vmatprep.mubr.f32.mxu0 0.0
  %6050 = vmatmul.mubr.f32.gmra.mrb[0].mxu0 %v5922
  %v6051 = vpop.f32.mrb[0].mxu0
  %v6052 = vadd.f32 0.0, %v6051
  %v6053 = vpop.f32.mrb[0].mxu0
  %6054 = vmatprep.mubr.f32.mxu0 0.0
  %6055 = vmatmul.mubr.f32.gmra.mrb[0].mxu0 %v5925
  %v6056 = vpop.f32.mrb[0].mxu0
  %v6057 = vadd.f32 0.0, %v6056
  %v6058 = vpop.f32.mrb[0].mxu0
  %6059 = vmatprep.mubr.f32.mxu0 0.0
  %6060 = vmatmul.mubr.f32.gmra.mrb[0].mxu0 %v5928
  %v6061 = vpop.f32.mrb[0].mxu0
  %v6062 = vadd.f32 0.0, %v6061
  %v6063 = vpop.f32.mrb[0].mxu0
  %6064 = vmatprep.mubr.f32.mxu0 0.0
  %6065 = vmatmul.mubr.f32.gmra.mrb[0].mxu0 %v5931
  %v6066 = vpop.f32.mrb[0].mxu0
  %v6067 = vadd.f32 0.0, %v6066
  %v6068 = vpop.f32.mrb[0].mxu0
  %6069 = vmatprep.mubr.f32.mxu0 0.0
  %6070 = vmatmul.mubr.f32.gmra.mrb[0].mxu0 %v5934
  %v6071 = vpop.f32.mrb[0].mxu0
  %v6072 = vadd.f32 0.0, %v6071
  %v6073 = vpop.f32.mrb[0].mxu0
  %6074 = vdwg.mxu0
  %v6075 = vadd.f32 %v5804, %v6003
  %v6076 = vadd.f32 %v5809, %v6008
  %v6077 = vadd.f32 %v5814, %v6013
  %v6078 = vadd.f32 %v5819, %v6018
  %v6079 = vadd.f32 %v5824, %v6023
  %v6080 = vadd.f32 %v5829, %v6028
  %v6081 = vadd.f32 %v5834, %v6033
  %v6082 = vadd.f32 %v5843, %v6042
  %v6083 = vadd.f32 %v5848, %v6047
  %v6084 = vadd.f32 %v5853, %v6052
  %v6085 = vadd.f32 %v5858, %v6057
  %v6086 = vadd.f32 %v5863, %v6062
  %v6087 = vadd.f32 %v5868, %v6067
  %v6088 = vadd.f32 %v5873, %v6072
  %6089 = vmatprep.subr.mxu0 0.0
  %6090 = vmatpush1.msra.mxu0 %v4272
  %6091 = vmatprep.subr.mxu0 0.0
  %6092 = vmatpush1.msra.mxu0 %v4273
  %6093 = vmatprep.subr.mxu0 0.0
  %6094 = vmatpush1.msra.mxu0 %v4274
  %6095 = vmatprep.subr.mxu0 0.0
  %6096 = vmatpush1.msra.mxu0 %v4275
  %6097 = vmatprep.subr.mxu0 0.0
  %6098 = vmatpush1.msra.mxu0 0.0
  %6099 = vmatprep.subr.mxu0 0.0
  %6100 = vmatpush1.msra.mxu0 0.0
  %6101 = vmatprep.subr.mxu0 0.0
  %6102 = vmatpush1.msra.mxu0 0.0
  %6103 = vmatprep.subr.mxu0 0.0
  %6104 = vmatpush1.msra.mxu0 0.0
  %6105 = vmatprep.subr.mxu0 0.0
  %6106 = vmatpush1.msra.mxu0 0.0
  %6107 = vmatprep.subr.mxu0 0.0
  %6108 = vmatpush1.msra.mxu0 0.0
  %6109 = vmatprep.subr.mxu0 0.0
  %6110 = vmatpush1.msra.mxu0 0.0
  %6111 = vmatprep.subr.mxu0 0.0
  %6112 = vmatpush1.msra.mxu0 0.0
  %6113 = vmatprep.subr.mxu0 0.0
  %6114 = vmatpush1.msra.mxu0 0.0
  %6115 = vmatprep.subr.mxu0 0.0
  %6116 = vmatpush1.msra.mxu0 0.0
  %6117 = vmatprep.subr.mxu0 0.0
  %6118 = vmatpush1.msra.mxu0 0.0
  %6119 = vmatprep.subr.mxu0 0.0
  %6120 = vmatpush1.msra.mxu0 0.0
  %6121 = vmatprep.subr.mxu0 0.0
  %6122 = vmatpush1.msra.mxu0 0.0
  %6123 = vmatprep.subr.mxu0 0.0
  %6124 = vmatpush1.msra.mxu0 0.0
  %6125 = vmatprep.subr.mxu0 0.0
  %6126 = vmatpush1.msra.mxu0 0.0
  %6127 = vmatprep.subr.mxu0 0.0
  %6128 = vmatpush1.msra.mxu0 0.0
  %6129 = vmatprep.subr.mxu0 0.0
  %6130 = vmatpush1.msra.mxu0 0.0
  %6131 = vmatprep.subr.mxu0 0.0
  %6132 = vmatpush1.msra.mxu0 0.0
  %6133 = vmatprep.subr.mxu0 0.0
  %6134 = vmatpush1.msra.mxu0 0.0
  %6135 = vmatprep.subr.mxu0 0.0
  %6136 = vmatpush1.msra.mxu0 0.0
  %6137 = vmatprep.subr.mxu0 0.0
  %6138 = vmatpush1.msra.mxu0 0.0
  %6139 = vmatprep.subr.mxu0 0.0
  %6140 = vmatpush1.msra.mxu0 0.0
  %6141 = vmatprep.subr.mxu0 0.0
  %6142 = vmatpush1.msra.mxu0 0.0
  %6143 = vmatprep.subr.mxu0 0.0
  %6144 = vmatpush1.msra.mxu0 0.0
  %6145 = vmatprep.subr.mxu0 0.0
  %6146 = vmatpush1.msra.mxu0 0.0
  %6147 = vmatprep.subr.mxu0 0.0
  %6148 = vmatpush1.msra.mxu0 0.0
  %6149 = vmatprep.subr.mxu0 0.0
  %6150 = vmatpush1.msra.mxu0 0.0
  %6151 = vmatprep.subr.mxu0 0.0
  %6152 = vmatpush1.msra.mxu0 0.0
  %6153 = vmatprep.mubr.f32.mxu0 0.0
  %6154 = vmatmul.mubr.f32.gmra.mrb[0].mxu0 %v4495
  %v6155 = vpop.f32.mrb[0].mxu0
  %v6156 = vadd.f32 0.0, %v6155
  %v6157 = vpop.f32.mrb[0].mxu0
  %6158 = vmatprep.mubr.f32.mxu0 0.0
  %6159 = vmatmul.mubr.f32.gmra.mrb[0].mxu0 %v4498
  %v6160 = vpop.f32.mrb[0].mxu0
  %v6161 = vadd.f32 0.0, %v6160
  %v6162 = vpop.f32.mrb[0].mxu0
  %6163 = vmatprep.mubr.f32.mxu0 0.0
  %6164 = vmatmul.mubr.f32.gmra.mrb[0].mxu0 %v4501
  %v6165 = vpop.f32.mrb[0].mxu0
  %v6166 = vadd.f32 0.0, %v6165
  %v6167 = vpop.f32.mrb[0].mxu0
  %6168 = vmatprep.mubr.f32.mxu0 0.0
  %6169 = vmatmul.mubr.f32.gmra.mrb[0].mxu0 %v4504
  %v6170 = vpop.f32.mrb[0].mxu0
  %v6171 = vadd.f32 0.0, %v6170
  %v6172 = vpop.f32.mrb[0].mxu0
  %6173 = vmatprep.mubr.f32.mxu0 0.0
  %6174 = vmatmul.mubr.f32.gmra.mrb[0].mxu0 %v4507
  %v6175 = vpop.f32.mrb[0].mxu0
  %v6176 = vadd.f32 0.0, %v6175
  %v6177 = vpop.f32.mrb[0].mxu0
  %6178 = vmatprep.mubr.f32.mxu0 0.0
  %6179 = vmatmul.mubr.f32.gmra.mrb[0].mxu0 %v4510
  %v6180 = vpop.f32.mrb[0].mxu0
  %v6181 = vadd.f32 0.0, %v6180
  %v6182 = vpop.f32.mrb[0].mxu0
  %6183 = vmatprep.mubr.f32.mxu0 0.0
  %6184 = vmatmul.mubr.f32.gmra.mrb[0].mxu0 %v4513
  %v6185 = vpop.f32.mrb[0].mxu0
  %v6186 = vadd.f32 0.0, %v6185
  %v6187 = vpop.f32.mrb[0].mxu0
  %6188 = vmatprep.mubr.f32.mxu0 0.0
  %6189 = vmatmul.mubr.f32.gmra.mrb[0].mxu0 %v4516
  %v6190 = vpop.f32.mrb[0].mxu0
  %v6191 = vpop.f32.mrb[0].mxu0
  %6192 = vmatprep.mubr.f32.mxu0 0.0
  %6193 = vmatmul.mubr.f32.gmra.mrb[0].mxu0 %v4519
  %v6194 = vpop.f32.mrb[0].mxu0
  %v6195 = vadd.f32 0.0, %v6194
  %v6196 = vpop.f32.mrb[0].mxu0
  %6197 = vmatprep.mubr.f32.mxu0 0.0
  %6198 = vmatmul.mubr.f32.gmra.mrb[0].mxu0 %v4522
  %v6199 = vpop.f32.mrb[0].mxu0
  %v6200 = vadd.f32 0.0, %v6199
  %v6201 = vpop.f32.mrb[0].mxu0
  %6202 = vmatprep.mubr.f32.mxu0 0.0
  %6203 = vmatmul.mubr.f32.gmra.mrb[0].mxu0 %v4525
  %v6204 = vpop.f32.mrb[0].mxu0
  %v6205 = vadd.f32 0.0, %v6204
  %v6206 = vpop.f32.mrb[0].mxu0
  %6207 = vmatprep.mubr.f32.mxu0 0.0
  %6208 = vmatmul.mubr.f32.gmra.mrb[0].mxu0 %v4528
  %v6209 = vpop.f32.mrb[0].mxu0
  %v6210 = vadd.f32 0.0, %v6209
  %v6211 = vpop.f32.mrb[0].mxu0
  %6212 = vmatprep.mubr.f32.mxu0 0.0
  %6213 = vmatmul.mubr.f32.gmra.mrb[0].mxu0 %v4531
  %v6214 = vpop.f32.mrb[0].mxu0
  %v6215 = vadd.f32 0.0, %v6214
  %v6216 = vpop.f32.mrb[0].mxu0
  %6217 = vmatprep.mubr.f32.mxu0 0.0
  %6218 = vmatmul.mubr.f32.gmra.mrb[0].mxu0 %v4534
  %v6219 = vpop.f32.mrb[0].mxu0
  %v6220 = vadd.f32 0.0, %v6219
  %v6221 = vpop.f32.mrb[0].mxu0
  %6222 = vmatprep.mubr.f32.mxu0 0.0
  %6223 = vmatmul.mubr.f32.gmra.mrb[0].mxu0 %v4537
  %v6224 = vpop.f32.mrb[0].mxu0
  %v6225 = vadd.f32 0.0, %v6224
  %v6226 = vpop.f32.mrb[0].mxu0
  %6227 = vdwg.mxu0
  %v6228 = vadd.f32 %v6075, %v6156
  %v6229 = vadd.f32 %v6076, %v6161
  %v6230 = vadd.f32 %v6077, %v6166
  %v6231 = vadd.f32 %v6078, %v6171
  %v6232 = vadd.f32 %v6079, %v6176
  %v6233 = vadd.f32 %v6080, %v6181
  %v6234 = vadd.f32 %v6081, %v6186
  %v6235 = vadd.f32 %v6082, %v6195
  %v6236 = vadd.f32 %v6083, %v6200
  %v6237 = vadd.f32 %v6084, %v6205
  %v6238 = vadd.f32 %v6085, %v6210
  %v6239 = vadd.f32 %v6086, %v6215
  %v6240 = vadd.f32 %v6087, %v6220
  %v6241 = vadd.f32 %v6088, %v6225
  %6242 = vmatprep.subr.mxu0 0.0
  %6243 = vmatpush1.msra.mxu0 %v4490
  %6244 = vmatprep.subr.mxu0 0.0
  %6245 = vmatpush1.msra.mxu0 %v4491
  %6246 = vmatprep.subr.mxu0 0.0
  %6247 = vmatpush1.msra.mxu0 %v4492
  %6248 = vmatprep.subr.mxu0 0.0
  %6249 = vmatpush1.msra.mxu0 %v4493
  %6250 = vmatprep.subr.mxu0 0.0
  %6251 = vmatpush1.msra.mxu0 0.0
  %6252 = vmatprep.subr.mxu0 0.0
  %6253 = vmatpush1.msra.mxu0 0.0
  %6254 = vmatprep.subr.mxu0 0.0
  %6255 = vmatpush1.msra.mxu0 0.0
  %6256 = vmatprep.subr.mxu0 0.0
  %6257 = vmatpush1.msra.mxu0 0.0
  %6258 = vmatprep.subr.mxu0 0.0
  %6259 = vmatpush1.msra.mxu0 0.0
  %6260 = vmatprep.subr.mxu0 0.0
  %6261 = vmatpush1.msra.mxu0 0.0
  %6262 = vmatprep.subr.mxu0 0.0
  %6263 = vmatpush1.msra.mxu0 0.0
  %6264 = vmatprep.subr.mxu0 0.0
  %6265 = vmatpush1.msra.mxu0 0.0
  %6266 = vmatprep.subr.mxu0 0.0
  %6267 = vmatpush1.msra.mxu0 0.0
  %6268 = vmatprep.subr.mxu0 0.0
  %6269 = vmatpush1.msra.mxu0 0.0
  %6270 = vmatprep.subr.mxu0 0.0
  %6271 = vmatpush1.msra.mxu0 0.0
  %6272 = vmatprep.subr.mxu0 0.0
  %6273 = vmatpush1.msra.mxu0 0.0
  %6274 = vmatprep.subr.mxu0 0.0
  %6275 = vmatpush1.msra.mxu0 0.0
  %6276 = vmatprep.subr.mxu0 0.0
  %6277 = vmatpush1.msra.mxu0 0.0
  %6278 = vmatprep.subr.mxu0 0.0
  %6279 = vmatpush1.msra.mxu0 0.0
  %6280 = vmatprep.subr.mxu0 0.0
  %6281 = vmatpush1.msra.mxu0 0.0
  %6282 = vmatprep.subr.mxu0 0.0
  %6283 = vmatpush1.msra.mxu0 0.0
  %6284 = vmatprep.subr.mxu0 0.0
  %6285 = vmatpush1.msra.mxu0 0.0
  %6286 = vmatprep.subr.mxu0 0.0
  %6287 = vmatpush1.msra.mxu0 0.0
  %6288 = vmatprep.subr.mxu0 0.0
  %6289 = vmatpush1.msra.mxu0 0.0
  %6290 = vmatprep.subr.mxu0 0.0
  %6291 = vmatpush1.msra.mxu0 0.0
  %6292 = vmatprep.subr.mxu0 0.0
  %6293 = vmatpush1.msra.mxu0 0.0
  %6294 = vmatprep.subr.mxu0 0.0
  %6295 = vmatpush1.msra.mxu0 0.0
  %6296 = vmatprep.subr.mxu0 0.0
  %6297 = vmatpush1.msra.mxu0 0.0
  %6298 = vmatprep.subr.mxu0 0.0
  %6299 = vmatpush1.msra.mxu0 0.0
  %6300 = vmatprep.subr.mxu0 0.0
  %6301 = vmatpush1.msra.mxu0 0.0
  %6302 = vmatprep.subr.mxu0 0.0
  %6303 = vmatpush1.msra.mxu0 0.0
  %6304 = vmatprep.subr.mxu0 0.0
  %6305 = vmatpush1.msra.mxu0 0.0
  %6306 = vmatprep.mubr.f32.mxu0 0.0
  %6307 = vmatmul.mubr.f32.gmra.mrb[0].mxu0 %v4713
  %v6308 = vpop.f32.mrb[0].mxu0
  %v6309 = vadd.f32 0.0, %v6308
  %v6310 = vpop.f32.mrb[0].mxu0
  %6311 = vmatprep.mubr.f32.mxu0 0.0
  %6312 = vmatmul.mubr.f32.gmra.mrb[0].mxu0 %v4716
  %v6313 = vpop.f32.mrb[0].mxu0
  %v6314 = vadd.f32 0.0, %v6313
  %v6315 = vpop.f32.mrb[0].mxu0
  %6316 = vmatprep.mubr.f32.mxu0 0.0
  %6317 = vmatmul.mubr.f32.gmra.mrb[0].mxu0 %v4719
  %v6318 = vpop.f32.mrb[0].mxu0
  %v6319 = vadd.f32 0.0, %v6318
  %v6320 = vpop.f32.mrb[0].mxu0
  %6321 = vmatprep.mubr.f32.mxu0 0.0
  %6322 = vmatmul.mubr.f32.gmra.mrb[0].mxu0 %v4722
  %v6323 = vpop.f32.mrb[0].mxu0
  %v6324 = vadd.f32 0.0, %v6323
  %v6325 = vpop.f32.mrb[0].mxu0
  %6326 = vmatprep.mubr.f32.mxu0 0.0
  %6327 = vmatmul.mubr.f32.gmra.mrb[0].mxu0 %v4725
  %v6328 = vpop.f32.mrb[0].mxu0
  %v6329 = vadd.f32 0.0, %v6328
  %v6330 = vpop.f32.mrb[0].mxu0
  %6331 = vmatprep.mubr.f32.mxu0 0.0
  %6332 = vmatmul.mubr.f32.gmra.mrb[0].mxu0 %v4728
  %v6333 = vpop.f32.mrb[0].mxu0
  %v6334 = vadd.f32 0.0, %v6333
  %v6335 = vpop.f32.mrb[0].mxu0
  %6336 = vmatprep.mubr.f32.mxu0 0.0
  %6337 = vmatmul.mubr.f32.gmra.mrb[0].mxu0 %v4731
  %v6338 = vpop.f32.mrb[0].mxu0
  %v6339 = vadd.f32 0.0, %v6338
  %v6340 = vpop.f32.mrb[0].mxu0
  %6341 = vmatprep.mubr.f32.mxu0 0.0
  %6342 = vmatmul.mubr.f32.gmra.mrb[0].mxu0 %v4734
  %v6343 = vpop.f32.mrb[0].mxu0
  %v6344 = vpop.f32.mrb[0].mxu0
  %6345 = vmatprep.mubr.f32.mxu0 0.0
  %6346 = vmatmul.mubr.f32.gmra.mrb[0].mxu0 %v4737
  %v6347 = vpop.f32.mrb[0].mxu0
  %v6348 = vadd.f32 0.0, %v6347
  %v6349 = vpop.f32.mrb[0].mxu0
  %6350 = vmatprep.mubr.f32.mxu0 0.0
  %6351 = vmatmul.mubr.f32.gmra.mrb[0].mxu0 %v4740
  %v6352 = vpop.f32.mrb[0].mxu0
  %v6353 = vadd.f32 0.0, %v6352
  %v6354 = vpop.f32.mrb[0].mxu0
  %6355 = vmatprep.mubr.f32.mxu0 0.0
  %6356 = vmatmul.mubr.f32.gmra.mrb[0].mxu0 %v4743
  %v6357 = vpop.f32.mrb[0].mxu0
  %v6358 = vadd.f32 0.0, %v6357
  %v6359 = vpop.f32.mrb[0].mxu0
  %6360 = vmatprep.mubr.f32.mxu0 0.0
  %6361 = vmatmul.mubr.f32.gmra.mrb[0].mxu0 %v4746
  %v6362 = vpop.f32.mrb[0].mxu0
  %v6363 = vadd.f32 0.0, %v6362
  %v6364 = vpop.f32.mrb[0].mxu0
  %6365 = vmatprep.mubr.f32.mxu0 0.0
  %6366 = vmatmul.mubr.f32.gmra.mrb[0].mxu0 %v4749
  %v6367 = vpop.f32.mrb[0].mxu0
  %v6368 = vadd.f32 0.0, %v6367
  %v6369 = vpop.f32.mrb[0].mxu0
  %6370 = vmatprep.mubr.f32.mxu0 0.0
  %6371 = vmatmul.mubr.f32.gmra.mrb[0].mxu0 %v4752
  %v6372 = vpop.f32.mrb[0].mxu0
  %v6373 = vadd.f32 0.0, %v6372
  %v6374 = vpop.f32.mrb[0].mxu0
  %6375 = vmatprep.mubr.f32.mxu0 0.0
  %6376 = vmatmul.mubr.f32.gmra.mrb[0].mxu0 %v4755
  %v6377 = vpop.f32.mrb[0].mxu0
  %v6378 = vadd.f32 0.0, %v6377
  %v6379 = vpop.f32.mrb[0].mxu0
  %6380 = vdwg.mxu0
  %v6381 = vadd.f32 %v6228, %v6309
  %v6382 = vadd.f32 %v6229, %v6314
  %v6383 = vadd.f32 %v6230, %v6319
  %v6384 = vadd.f32 %v6231, %v6324
  %v6385 = vadd.f32 %v6232, %v6329
  %v6386 = vadd.f32 %v6233, %v6334
  %v6387 = vadd.f32 %v6234, %v6339
  %v6388 = vadd.f32 %v6235, %v6348
  %v6389 = vadd.f32 %v6236, %v6353
  %v6390 = vadd.f32 %v6237, %v6358
  %v6391 = vadd.f32 %v6238, %v6363
  %v6392 = vadd.f32 %v6239, %v6368
  %v6393 = vadd.f32 %v6240, %v6373
  %v6394 = vadd.f32 %v6241, %v6378
  %v6395 = vld [vmem:[#allocation2 + $0x181] sm:$0xff]
  %v6396 = vld [vmem:[#allocation2 + $0x189] sm:$0xff]
  %v6397 = vld [vmem:[#allocation2 + $0x191] sm:$0xff]
  %v6398 = vld [vmem:[#allocation2 + $0x199] sm:$0xff]
  %v6399 = vld [vmem:[#allocation2 + $0x1a1] sm:$0xff]
  %v6400 = vld [vmem:[#allocation2 + $0x1a9] sm:$0xff]
  %v6401 = vld [vmem:[#allocation2 + $0x1b1] sm:$0xff]
  %v6402 = vld [vmem:[#allocation2 + $0x1b9] sm:$0xff]
  %v6403 = vld [vmem:[#allocation2 + $0x1c1] sm:$0xff]
  %v6404 = vld [vmem:[#allocation2 + $0x1c9] sm:$0xff]
  %v6405 = vld [vmem:[#allocation2 + $0x1d1] sm:$0xff]
  %v6406 = vld [vmem:[#allocation2 + $0x1d9] sm:$0xff]
  %v6407 = vld [vmem:[#allocation2 + $0x1e1] sm:$0xff]
  %v6408 = vld [vmem:[#allocation2 + $0x1e9] sm:$0xff]
  %v6409 = vld [vmem:[#allocation2 + $0x1f1] sm:$0xff]
  %v6411 = vsel %vm3500, %v6395, 0
  %v6414 = vsel %vm3500, %v6396, 0
  %v6417 = vsel %vm3500, %v6397, 0
  %v6420 = vsel %vm3500, %v6398, 0
  %v6423 = vsel %vm3500, %v6399, 0
  %v6426 = vsel %vm3500, %v6400, 0
  %v6429 = vsel %vm3500, %v6401, 0
  %v6432 = vsel %vm3500, %v6402, 0
  %v6435 = vsel %vm3500, %v6403, 0
  %v6438 = vsel %vm3500, %v6404, 0
  %v6441 = vsel %vm3500, %v6405, 0
  %v6444 = vsel %vm3500, %v6406, 0
  %v6447 = vsel %vm3500, %v6407, 0
  %v6450 = vsel %vm3500, %v6408, 0
  %v6453 = vsel %vm3500, %v6409, 0
  %6455 = vmatprep.subr.mxu0 0.0
  %6456 = vmatpush1.msra.mxu0 %v4708
  %6457 = vmatprep.subr.mxu0 0.0
  %6458 = vmatpush1.msra.mxu0 %v4709
  %6459 = vmatprep.subr.mxu0 0.0
  %6460 = vmatpush1.msra.mxu0 %v4710
  %6461 = vmatprep.subr.mxu0 0.0
  %6462 = vmatpush1.msra.mxu0 %v4711
  %6463 = vmatprep.subr.mxu0 0.0
  %6464 = vmatpush1.msra.mxu0 0.0
  %6465 = vmatprep.subr.mxu0 0.0
  %6466 = vmatpush1.msra.mxu0 0.0
  %6467 = vmatprep.subr.mxu0 0.0
  %6468 = vmatpush1.msra.mxu0 0.0
  %6469 = vmatprep.subr.mxu0 0.0
  %6470 = vmatpush1.msra.mxu0 0.0
  %6471 = vmatprep.subr.mxu0 0.0
  %6472 = vmatpush1.msra.mxu0 0.0
  %6473 = vmatprep.subr.mxu0 0.0
  %6474 = vmatpush1.msra.mxu0 0.0
  %6475 = vmatprep.subr.mxu0 0.0
  %6476 = vmatpush1.msra.mxu0 0.0
  %6477 = vmatprep.subr.mxu0 0.0
  %6478 = vmatpush1.msra.mxu0 0.0
  %6479 = vmatprep.subr.mxu0 0.0
  %6480 = vmatpush1.msra.mxu0 0.0
  %6481 = vmatprep.subr.mxu0 0.0
  %6482 = vmatpush1.msra.mxu0 0.0
  %6483 = vmatprep.subr.mxu0 0.0
  %6484 = vmatpush1.msra.mxu0 0.0
  %6485 = vmatprep.subr.mxu0 0.0
  %6486 = vmatpush1.msra.mxu0 0.0
  %6487 = vmatprep.subr.mxu0 0.0
  %6488 = vmatpush1.msra.mxu0 0.0
  %6489 = vmatprep.subr.mxu0 0.0
  %6490 = vmatpush1.msra.mxu0 0.0
  %6491 = vmatprep.subr.mxu0 0.0
  %6492 = vmatpush1.msra.mxu0 0.0
  %6493 = vmatprep.subr.mxu0 0.0
  %6494 = vmatpush1.msra.mxu0 0.0
  %6495 = vmatprep.subr.mxu0 0.0
  %6496 = vmatpush1.msra.mxu0 0.0
  %6497 = vmatprep.subr.mxu0 0.0
  %6498 = vmatpush1.msra.mxu0 0.0
  %6499 = vmatprep.subr.mxu0 0.0
  %6500 = vmatpush1.msra.mxu0 0.0
  %6501 = vmatprep.subr.mxu0 0.0
  %6502 = vmatpush1.msra.mxu0 0.0
  %6503 = vmatprep.subr.mxu0 0.0
  %6504 = vmatpush1.msra.mxu0 0.0
  %6505 = vmatprep.subr.mxu0 0.0
  %6506 = vmatpush1.msra.mxu0 0.0
  %6507 = vmatprep.subr.mxu0 0.0
  %6508 = vmatpush1.msra.mxu0 0.0
  %6509 = vmatprep.subr.mxu0 0.0
  %6510 = vmatpush1.msra.mxu0 0.0
  %6511 = vmatprep.subr.mxu0 0.0
  %6512 = vmatpush1.msra.mxu0 0.0
  %6513 = vmatprep.subr.mxu0 0.0
  %6514 = vmatpush1.msra.mxu0 0.0
  %6515 = vmatprep.subr.mxu0 0.0
  %6516 = vmatpush1.msra.mxu0 0.0
  %6517 = vmatprep.subr.mxu0 0.0
  %6518 = vmatpush1.msra.mxu0 0.0
  %6519 = vmatprep.mubr.f32.mxu0 0.0
  %6520 = vmatmul.mubr.f32.gmra.mrb[0].mxu0 %v6411
  %v6521 = vpop.f32.mrb[0].mxu0
  %v6522 = vadd.f32 0.0, %v6521
  %v6523 = vpop.f32.mrb[0].mxu0
  %6524 = vmatprep.mubr.f32.mxu0 0.0
  %6525 = vmatmul.mubr.f32.gmra.mrb[0].mxu0 %v6414
  %v6526 = vpop.f32.mrb[0].mxu0
  %v6527 = vadd.f32 0.0, %v6526
  %v6528 = vpop.f32.mrb[0].mxu0
  %6529 = vmatprep.mubr.f32.mxu0 0.0
  %6530 = vmatmul.mubr.f32.gmra.mrb[0].mxu0 %v6417
  %v6531 = vpop.f32.mrb[0].mxu0
  %v6532 = vadd.f32 0.0, %v6531
  %v6533 = vpop.f32.mrb[0].mxu0
  %6534 = vmatprep.mubr.f32.mxu0 0.0
  %6535 = vmatmul.mubr.f32.gmra.mrb[0].mxu0 %v6420
  %v6536 = vpop.f32.mrb[0].mxu0
  %v6537 = vadd.f32 0.0, %v6536
  %v6538 = vpop.f32.mrb[0].mxu0
  %6539 = vmatprep.mubr.f32.mxu0 0.0
  %6540 = vmatmul.mubr.f32.gmra.mrb[0].mxu0 %v6423
  %v6541 = vpop.f32.mrb[0].mxu0
  %v6542 = vadd.f32 0.0, %v6541
  %v6543 = vpop.f32.mrb[0].mxu0
  %6544 = vmatprep.mubr.f32.mxu0 0.0
  %6545 = vmatmul.mubr.f32.gmra.mrb[0].mxu0 %v6426
  %v6546 = vpop.f32.mrb[0].mxu0
  %v6547 = vadd.f32 0.0, %v6546
  %v6548 = vpop.f32.mrb[0].mxu0
  %6549 = vmatprep.mubr.f32.mxu0 0.0
  %6550 = vmatmul.mubr.f32.gmra.mrb[0].mxu0 %v6429
  %v6551 = vpop.f32.mrb[0].mxu0
  %v6552 = vadd.f32 0.0, %v6551
  %v6553 = vpop.f32.mrb[0].mxu0
  %6554 = vmatprep.mubr.f32.mxu0 0.0
  %6555 = vmatmul.mubr.f32.gmra.mrb[0].mxu0 %v6432
  %v6556 = vpop.f32.mrb[0].mxu0
  %v6557 = vpop.f32.mrb[0].mxu0
  %6558 = vmatprep.mubr.f32.mxu0 0.0
  %6559 = vmatmul.mubr.f32.gmra.mrb[0].mxu0 %v6435
  %v6560 = vpop.f32.mrb[0].mxu0
  %v6561 = vadd.f32 0.0, %v6560
  %v6562 = vpop.f32.mrb[0].mxu0
  %6563 = vmatprep.mubr.f32.mxu0 0.0
  %6564 = vmatmul.mubr.f32.gmra.mrb[0].mxu0 %v6438
  %v6565 = vpop.f32.mrb[0].mxu0
  %v6566 = vadd.f32 0.0, %v6565
  %v6567 = vpop.f32.mrb[0].mxu0
  %6568 = vmatprep.mubr.f32.mxu0 0.0
  %6569 = vmatmul.mubr.f32.gmra.mrb[0].mxu0 %v6441
  %v6570 = vpop.f32.mrb[0].mxu0
  %v6571 = vadd.f32 0.0, %v6570
  %v6572 = vpop.f32.mrb[0].mxu0
  %6573 = vmatprep.mubr.f32.mxu0 0.0
  %6574 = vmatmul.mubr.f32.gmra.mrb[0].mxu0 %v6444
  %v6575 = vpop.f32.mrb[0].mxu0
  %v6576 = vadd.f32 0.0, %v6575
  %v6577 = vpop.f32.mrb[0].mxu0
  %6578 = vmatprep.mubr.f32.mxu0 0.0
  %6579 = vmatmul.mubr.f32.gmra.mrb[0].mxu0 %v6447
  %v6580 = vpop.f32.mrb[0].mxu0
  %v6581 = vadd.f32 0.0, %v6580
  %v6582 = vpop.f32.mrb[0].mxu0
  %6583 = vmatprep.mubr.f32.mxu0 0.0
  %6584 = vmatmul.mubr.f32.gmra.mrb[0].mxu0 %v6450
  %v6585 = vpop.f32.mrb[0].mxu0
  %v6586 = vadd.f32 0.0, %v6585
  %v6587 = vpop.f32.mrb[0].mxu0
  %6588 = vmatprep.mubr.f32.mxu0 0.0
  %6589 = vmatmul.mubr.f32.gmra.mrb[0].mxu0 %v6453
  %v6590 = vpop.f32.mrb[0].mxu0
  %v6591 = vadd.f32 0.0, %v6590
  %v6592 = vpop.f32.mrb[0].mxu0
  %6593 = vdwg.mxu0
  %v6594 = vadd.f32 %v6381, %v6522
  %v6595 = vadd.f32 %v6382, %v6527
  %v6596 = vadd.f32 %v6383, %v6532
  %v6597 = vadd.f32 %v6384, %v6537
  %v6598 = vadd.f32 %v6385, %v6542
  %v6599 = vadd.f32 %v6386, %v6547
  %v6600 = vadd.f32 %v6387, %v6552
  %v6601 = vadd.f32 %v6388, %v6561
  %v6602 = vadd.f32 %v6389, %v6566
  %v6603 = vadd.f32 %v6390, %v6571
  %v6604 = vadd.f32 %v6391, %v6576
  %v6605 = vadd.f32 %v6392, %v6581
  %v6606 = vadd.f32 %v6393, %v6586
  %v6607 = vadd.f32 %v6394, %v6591
  %6608 = vmatprep.subr.mxu0 0.0
  %6609 = vmatpush1.msra.mxu0 %v4926
  %6610 = vmatprep.subr.mxu0 0.0
  %6611 = vmatpush1.msra.mxu0 %v4927
  %6612 = vmatprep.subr.mxu0 0.0
  %6613 = vmatpush1.msra.mxu0 %v4928
  %6614 = vmatprep.subr.mxu0 0.0
  %6615 = vmatpush1.msra.mxu0 %v4929
  %6616 = vmatprep.subr.mxu0 0.0
  %6617 = vmatpush1.msra.mxu0 0.0
  %6618 = vmatprep.subr.mxu0 0.0
  %6619 = vmatpush1.msra.mxu0 0.0
  %6620 = vmatprep.subr.mxu0 0.0
  %6621 = vmatpush1.msra.mxu0 0.0
  %6622 = vmatprep.subr.mxu0 0.0
  %6623 = vmatpush1.msra.mxu0 0.0
  %6624 = vmatprep.subr.mxu0 0.0
  %6625 = vmatpush1.msra.mxu0 0.0
  %6626 = vmatprep.subr.mxu0 0.0
  %6627 = vmatpush1.msra.mxu0 0.0
  %6628 = vmatprep.subr.mxu0 0.0
  %6629 = vmatpush1.msra.mxu0 0.0
  %6630 = vmatprep.subr.mxu0 0.0
  %6631 = vmatpush1.msra.mxu0 0.0
  %6632 = vmatprep.subr.mxu0 0.0
  %6633 = vmatpush1.msra.mxu0 0.0
  %6634 = vmatprep.subr.mxu0 0.0
  %6635 = vmatpush1.msra.mxu0 0.0
  %6636 = vmatprep.subr.mxu0 0.0
  %6637 = vmatpush1.msra.mxu0 0.0
  %6638 = vmatprep.subr.mxu0 0.0
  %6639 = vmatpush1.msra.mxu0 0.0
  %6640 = vmatprep.subr.mxu0 0.0
  %6641 = vmatpush1.msra.mxu0 0.0
  %6642 = vmatprep.subr.mxu0 0.0
  %6643 = vmatpush1.msra.mxu0 0.0
  %6644 = vmatprep.subr.mxu0 0.0
  %6645 = vmatpush1.msra.mxu0 0.0
  %6646 = vmatprep.subr.mxu0 0.0
  %6647 = vmatpush1.msra.mxu0 0.0
  %6648 = vmatprep.subr.mxu0 0.0
  %6649 = vmatpush1.msra.mxu0 0.0
  %6650 = vmatprep.subr.mxu0 0.0
  %6651 = vmatpush1.msra.mxu0 0.0
  %6652 = vmatprep.subr.mxu0 0.0
  %6653 = vmatpush1.msra.mxu0 0.0
  %6654 = vmatprep.subr.mxu0 0.0
  %6655 = vmatpush1.msra.mxu0 0.0
  %6656 = vmatprep.subr.mxu0 0.0
  %6657 = vmatpush1.msra.mxu0 0.0
  %6658 = vmatprep.subr.mxu0 0.0
  %6659 = vmatpush1.msra.mxu0 0.0
  %6660 = vmatprep.subr.mxu0 0.0
  %6661 = vmatpush1.msra.mxu0 0.0
  %6662 = vmatprep.subr.mxu0 0.0
  %6663 = vmatpush1.msra.mxu0 0.0
  %6664 = vmatprep.subr.mxu0 0.0
  %6665 = vmatpush1.msra.mxu0 0.0
  %6666 = vmatprep.subr.mxu0 0.0
  %6667 = vmatpush1.msra.mxu0 0.0
  %6668 = vmatprep.subr.mxu0 0.0
  %6669 = vmatpush1.msra.mxu0 0.0
  %6670 = vmatprep.subr.mxu0 0.0
  %6671 = vmatpush1.msra.mxu0 0.0
  %6672 = vmatprep.mubr.f32.mxu0 0.0
  %6673 = vmatmul.mubr.f32.gmra.mrb[0].mxu0 %v5149
  %v6674 = vpop.f32.mrb[0].mxu0
  %v6675 = vadd.f32 0.0, %v6674
  %v6676 = vpop.f32.mrb[0].mxu0
  %6677 = vmatprep.mubr.f32.mxu0 0.0
  %6678 = vmatmul.mubr.f32.gmra.mrb[0].mxu0 %v5152
  %v6679 = vpop.f32.mrb[0].mxu0
  %v6680 = vadd.f32 0.0, %v6679
  %v6681 = vpop.f32.mrb[0].mxu0
  %6682 = vmatprep.mubr.f32.mxu0 0.0
  %6683 = vmatmul.mubr.f32.gmra.mrb[0].mxu0 %v5155
  %v6684 = vpop.f32.mrb[0].mxu0
  %v6685 = vadd.f32 0.0, %v6684
  %v6686 = vpop.f32.mrb[0].mxu0
  %6687 = vmatprep.mubr.f32.mxu0 0.0
  %6688 = vmatmul.mubr.f32.gmra.mrb[0].mxu0 %v5158
  %v6689 = vpop.f32.mrb[0].mxu0
  %v6690 = vadd.f32 0.0, %v6689
  %v6691 = vpop.f32.mrb[0].mxu0
  %6692 = vmatprep.mubr.f32.mxu0 0.0
  %6693 = vmatmul.mubr.f32.gmra.mrb[0].mxu0 %v5161
  %v6694 = vpop.f32.mrb[0].mxu0
  %v6695 = vadd.f32 0.0, %v6694
  %v6696 = vpop.f32.mrb[0].mxu0
  %6697 = vmatprep.mubr.f32.mxu0 0.0
  %6698 = vmatmul.mubr.f32.gmra.mrb[0].mxu0 %v5164
  %v6699 = vpop.f32.mrb[0].mxu0
  %v6700 = vadd.f32 0.0, %v6699
  %v6701 = vpop.f32.mrb[0].mxu0
  %6702 = vmatprep.mubr.f32.mxu0 0.0
  %6703 = vmatmul.mubr.f32.gmra.mrb[0].mxu0 %v5167
  %v6704 = vpop.f32.mrb[0].mxu0
  %v6705 = vadd.f32 0.0, %v6704
  %v6706 = vpop.f32.mrb[0].mxu0
  %6707 = vmatprep.mubr.f32.mxu0 0.0
  %6708 = vmatmul.mubr.f32.gmra.mrb[0].mxu0 %v5170
  %v6709 = vpop.f32.mrb[0].mxu0
  %v6710 = vpop.f32.mrb[0].mxu0
  %6711 = vmatprep.mubr.f32.mxu0 0.0
  %6712 = vmatmul.mubr.f32.gmra.mrb[0].mxu0 %v5173
  %v6713 = vpop.f32.mrb[0].mxu0
  %v6714 = vadd.f32 0.0, %v6713
  %v6715 = vpop.f32.mrb[0].mxu0
  %6716 = vmatprep.mubr.f32.mxu0 0.0
  %6717 = vmatmul.mubr.f32.gmra.mrb[0].mxu0 %v5176
  %v6718 = vpop.f32.mrb[0].mxu0
  %v6719 = vadd.f32 0.0, %v6718
  %v6720 = vpop.f32.mrb[0].mxu0
  %6721 = vmatprep.mubr.f32.mxu0 0.0
  %6722 = vmatmul.mubr.f32.gmra.mrb[0].mxu0 %v5179
  %v6723 = vpop.f32.mrb[0].mxu0
  %v6724 = vadd.f32 0.0, %v6723
  %v6725 = vpop.f32.mrb[0].mxu0
  %6726 = vmatprep.mubr.f32.mxu0 0.0
  %6727 = vmatmul.mubr.f32.gmra.mrb[0].mxu0 %v5182
  %v6728 = vpop.f32.mrb[0].mxu0
  %v6729 = vadd.f32 0.0, %v6728
  %v6730 = vpop.f32.mrb[0].mxu0
  %6731 = vmatprep.mubr.f32.mxu0 0.0
  %6732 = vmatmul.mubr.f32.gmra.mrb[0].mxu0 %v5185
  %v6733 = vpop.f32.mrb[0].mxu0
  %v6734 = vadd.f32 0.0, %v6733
  %v6735 = vpop.f32.mrb[0].mxu0
  %6736 = vmatprep.mubr.f32.mxu0 0.0
  %6737 = vmatmul.mubr.f32.gmra.mrb[0].mxu0 %v5188
  %v6738 = vpop.f32.mrb[0].mxu0
  %v6739 = vadd.f32 0.0, %v6738
  %v6740 = vpop.f32.mrb[0].mxu0
  %6741 = vmatprep.mubr.f32.mxu0 0.0
  %6742 = vmatmul.mubr.f32.gmra.mrb[0].mxu0 %v5191
  %v6743 = vpop.f32.mrb[0].mxu0
  %v6744 = vadd.f32 0.0, %v6743
  %v6745 = vpop.f32.mrb[0].mxu0
  %6746 = vdwg.mxu0
  %v6747 = vadd.f32 %v6594, %v6675
  %v6748 = vadd.f32 %v6595, %v6680
  %v6749 = vadd.f32 %v6596, %v6685
  %v6750 = vadd.f32 %v6597, %v6690
  %v6751 = vadd.f32 %v6598, %v6695
  %v6752 = vadd.f32 %v6599, %v6700
  %v6753 = vadd.f32 %v6600, %v6705
  %v6754 = vadd.f32 %v6601, %v6714
  %v6755 = vadd.f32 %v6602, %v6719
  %v6756 = vadd.f32 %v6603, %v6724
  %v6757 = vadd.f32 %v6604, %v6729
  %v6758 = vadd.f32 %v6605, %v6734
  %v6759 = vadd.f32 %v6606, %v6739
  %v6760 = vadd.f32 %v6607, %v6744
  %6761 = vmatprep.subr.mxu0 0.0
  %6762 = vmatpush1.msra.mxu0 %v5144
  %6763 = vmatprep.subr.mxu0 0.0
  %6764 = vmatpush1.msra.mxu0 %v5145
  %6765 = vmatprep.subr.mxu0 0.0
  %6766 = vmatpush1.msra.mxu0 %v5146
  %6767 = vmatprep.subr.mxu0 0.0
  %6768 = vmatpush1.msra.mxu0 %v5147
  %6769 = vmatprep.subr.mxu0 0.0
  %6770 = vmatpush1.msra.mxu0 0.0
  %6771 = vmatprep.subr.mxu0 0.0
  %6772 = vmatpush1.msra.mxu0 0.0
  %6773 = vmatprep.subr.mxu0 0.0
  %6774 = vmatpush1.msra.mxu0 0.0
  %6775 = vmatprep.subr.mxu0 0.0
  %6776 = vmatpush1.msra.mxu0 0.0
  %6777 = vmatprep.subr.mxu0 0.0
  %6778 = vmatpush1.msra.mxu0 0.0
  %6779 = vmatprep.subr.mxu0 0.0
  %6780 = vmatpush1.msra.mxu0 0.0
  %6781 = vmatprep.subr.mxu0 0.0
  %6782 = vmatpush1.msra.mxu0 0.0
  %6783 = vmatprep.subr.mxu0 0.0
  %6784 = vmatpush1.msra.mxu0 0.0
  %6785 = vmatprep.subr.mxu0 0.0
  %6786 = vmatpush1.msra.mxu0 0.0
  %6787 = vmatprep.subr.mxu0 0.0
  %6788 = vmatpush1.msra.mxu0 0.0
  %6789 = vmatprep.subr.mxu0 0.0
  %6790 = vmatpush1.msra.mxu0 0.0
  %6791 = vmatprep.subr.mxu0 0.0
  %6792 = vmatpush1.msra.mxu0 0.0
  %6793 = vmatprep.subr.mxu0 0.0
  %6794 = vmatpush1.msra.mxu0 0.0
  %6795 = vmatprep.subr.mxu0 0.0
  %6796 = vmatpush1.msra.mxu0 0.0
  %6797 = vmatprep.subr.mxu0 0.0
  %6798 = vmatpush1.msra.mxu0 0.0
  %6799 = vmatprep.subr.mxu0 0.0
  %6800 = vmatpush1.msra.mxu0 0.0
  %6801 = vmatprep.subr.mxu0 0.0
  %6802 = vmatpush1.msra.mxu0 0.0
  %6803 = vmatprep.subr.mxu0 0.0
  %6804 = vmatpush1.msra.mxu0 0.0
  %6805 = vmatprep.subr.mxu0 0.0
  %6806 = vmatpush1.msra.mxu0 0.0
  %6807 = vmatprep.subr.mxu0 0.0
  %6808 = vmatpush1.msra.mxu0 0.0
  %6809 = vmatprep.subr.mxu0 0.0
  %6810 = vmatpush1.msra.mxu0 0.0
  %6811 = vmatprep.subr.mxu0 0.0
  %6812 = vmatpush1.msra.mxu0 0.0
  %6813 = vmatprep.subr.mxu0 0.0
  %6814 = vmatpush1.msra.mxu0 0.0
  %6815 = vmatprep.subr.mxu0 0.0
  %6816 = vmatpush1.msra.mxu0 0.0
  %6817 = vmatprep.subr.mxu0 0.0
  %6818 = vmatpush1.msra.mxu0 0.0
  %6819 = vmatprep.subr.mxu0 0.0
  %6820 = vmatpush1.msra.mxu0 0.0
  %6821 = vmatprep.subr.mxu0 0.0
  %6822 = vmatpush1.msra.mxu0 0.0
  %6823 = vmatprep.subr.mxu0 0.0
  %6824 = vmatpush1.msra.mxu0 0.0
  %6825 = vmatprep.mubr.f32.mxu0 0.0
  %6826 = vmatmul.mubr.f32.gmra.mrb[0].mxu0 %v5367
  %v6827 = vpop.f32.mrb[0].mxu0
  %v6828 = vadd.f32 0.0, %v6827
  %v6829 = vpop.f32.mrb[0].mxu0
  %6830 = vmatprep.mubr.f32.mxu0 0.0
  %6831 = vmatmul.mubr.f32.gmra.mrb[0].mxu0 %v5370
  %v6832 = vpop.f32.mrb[0].mxu0
  %v6833 = vadd.f32 0.0, %v6832
  %v6834 = vpop.f32.mrb[0].mxu0
  %6835 = vmatprep.mubr.f32.mxu0 0.0
  %6836 = vmatmul.mubr.f32.gmra.mrb[0].mxu0 %v5373
  %v6837 = vpop.f32.mrb[0].mxu0
  %v6838 = vadd.f32 0.0, %v6837
  %v6839 = vpop.f32.mrb[0].mxu0
  %6840 = vmatprep.mubr.f32.mxu0 0.0
  %6841 = vmatmul.mubr.f32.gmra.mrb[0].mxu0 %v5376
  %v6842 = vpop.f32.mrb[0].mxu0
  %v6843 = vadd.f32 0.0, %v6842
  %v6844 = vpop.f32.mrb[0].mxu0
  %6845 = vmatprep.mubr.f32.mxu0 0.0
  %6846 = vmatmul.mubr.f32.gmra.mrb[0].mxu0 %v5379
  %v6847 = vpop.f32.mrb[0].mxu0
  %v6848 = vadd.f32 0.0, %v6847
  %v6849 = vpop.f32.mrb[0].mxu0
  %6850 = vmatprep.mubr.f32.mxu0 0.0
  %6851 = vmatmul.mubr.f32.gmra.mrb[0].mxu0 %v5382
  %v6852 = vpop.f32.mrb[0].mxu0
  %v6853 = vadd.f32 0.0, %v6852
  %v6854 = vpop.f32.mrb[0].mxu0
  %6855 = vmatprep.mubr.f32.mxu0 0.0
  %6856 = vmatmul.mubr.f32.gmra.mrb[0].mxu0 %v5385
  %v6857 = vpop.f32.mrb[0].mxu0
  %v6858 = vadd.f32 0.0, %v6857
  %v6859 = vpop.f32.mrb[0].mxu0
  %6860 = vmatprep.mubr.f32.mxu0 0.0
  %6861 = vmatmul.mubr.f32.gmra.mrb[0].mxu0 %v5388
  %v6862 = vpop.f32.mrb[0].mxu0
  %v6863 = vpop.f32.mrb[0].mxu0
  %6864 = vmatprep.mubr.f32.mxu0 0.0
  %6865 = vmatmul.mubr.f32.gmra.mrb[0].mxu0 %v5391
  %v6866 = vpop.f32.mrb[0].mxu0
  %v6867 = vadd.f32 0.0, %v6866
  %v6868 = vpop.f32.mrb[0].mxu0
  %6869 = vmatprep.mubr.f32.mxu0 0.0
  %6870 = vmatmul.mubr.f32.gmra.mrb[0].mxu0 %v5394
  %v6871 = vpop.f32.mrb[0].mxu0
  %v6872 = vadd.f32 0.0, %v6871
  %v6873 = vpop.f32.mrb[0].mxu0
  %6874 = vmatprep.mubr.f32.mxu0 0.0
  %6875 = vmatmul.mubr.f32.gmra.mrb[0].mxu0 %v5397
  %v6876 = vpop.f32.mrb[0].mxu0
  %v6877 = vadd.f32 0.0, %v6876
  %v6878 = vpop.f32.mrb[0].mxu0
  %6879 = vmatprep.mubr.f32.mxu0 0.0
  %6880 = vmatmul.mubr.f32.gmra.mrb[0].mxu0 %v5400
  %v6881 = vpop.f32.mrb[0].mxu0
  %v6882 = vadd.f32 0.0, %v6881
  %v6883 = vpop.f32.mrb[0].mxu0
  %6884 = vmatprep.mubr.f32.mxu0 0.0
  %6885 = vmatmul.mubr.f32.gmra.mrb[0].mxu0 %v5403
  %v6886 = vpop.f32.mrb[0].mxu0
  %v6887 = vadd.f32 0.0, %v6886
  %v6888 = vpop.f32.mrb[0].mxu0
  %6889 = vmatprep.mubr.f32.mxu0 0.0
  %6890 = vmatmul.mubr.f32.gmra.mrb[0].mxu0 %v5406
  %v6891 = vpop.f32.mrb[0].mxu0
  %v6892 = vadd.f32 0.0, %v6891
  %v6893 = vpop.f32.mrb[0].mxu0
  %6894 = vmatprep.mubr.f32.mxu0 0.0
  %6895 = vmatmul.mubr.f32.gmra.mrb[0].mxu0 %v5409
  %v6896 = vpop.f32.mrb[0].mxu0
  %v6897 = vadd.f32 0.0, %v6896
  %v6898 = vpop.f32.mrb[0].mxu0
  %6899 = vdwg.mxu0
  %v6900 = vadd.f32 %v6747, %v6828
  %v6901 = vadd.f32 %v6748, %v6833
  %v6902 = vadd.f32 %v6749, %v6838
  %v6903 = vadd.f32 %v6750, %v6843
  %v6904 = vadd.f32 %v6751, %v6848
  %v6905 = vadd.f32 %v6752, %v6853
  %v6906 = vadd.f32 %v6753, %v6858
  %v6907 = vadd.f32 %v6754, %v6867
  %v6908 = vadd.f32 %v6755, %v6872
  %v6909 = vadd.f32 %v6756, %v6877
  %v6910 = vadd.f32 %v6757, %v6882
  %v6911 = vadd.f32 %v6758, %v6887
  %v6912 = vadd.f32 %v6759, %v6892
  %v6913 = vadd.f32 %v6760, %v6897
  %v6914 = vld [vmem:[#allocation2 + $0x89] sm:$0xff]
  %v6915 = vld [vmem:[#allocation2 + $0x91] sm:$0xff]
  %v6916 = vld [vmem:[#allocation2 + $0x99] sm:$0xff]
  %v6917 = vld [vmem:[#allocation2 + $0xa1] sm:$0xff]
  %v6918 = vld [vmem:[#allocation2 + $0xa9] sm:$0xff]
  %v6919 = vld [vmem:[#allocation2 + $0xb1] sm:$0xff]
  %v6920 = vld [vmem:[#allocation2 + $0xb9] sm:$0xff]
  %v6921 = vld [vmem:[#allocation2 + $0xc1] sm:$0xff]
  %v6922 = vld [vmem:[#allocation2 + $0xc9] sm:$0xff]
  %v6923 = vld [vmem:[#allocation2 + $0xd1] sm:$0xff]
  %v6924 = vld [vmem:[#allocation2 + $0xd9] sm:$0xff]
  %v6925 = vld [vmem:[#allocation2 + $0xe1] sm:$0xff]
  %v6926 = vld [vmem:[#allocation2 + $0xe9] sm:$0xff]
  %v6927 = vld [vmem:[#allocation2 + $0xf1] sm:$0xff]
  %v6928 = vld [vmem:[#allocation2 + $0xf9] sm:$0xff]
  %v6930 = vsel %vm3500, %v6914, 0
  %v6933 = vsel %vm3500, %v6915, 0
  %v6936 = vsel %vm3500, %v6916, 0
  %v6939 = vsel %vm3500, %v6917, 0
  %v6942 = vsel %vm3500, %v6918, 0
  %v6945 = vsel %vm3500, %v6919, 0
  %v6948 = vsel %vm3500, %v6920, 0
  %v6951 = vsel %vm3500, %v6921, 0
  %v6954 = vsel %vm3500, %v6922, 0
  %v6957 = vsel %vm3500, %v6923, 0
  %v6960 = vsel %vm3500, %v6924, 0
  %v6963 = vsel %vm3500, %v6925, 0
  %v6966 = vsel %vm3500, %v6926, 0
  %v6969 = vsel %vm3500, %v6927, 0
  %v6972 = vsel %vm3500, %v6928, 0
  %6974 = vmatprep.subr.mxu0 0.0
  %6975 = vmatpush1.msra.mxu0 %v5362
  %6976 = vmatprep.subr.mxu0 0.0
  %6977 = vmatpush1.msra.mxu0 %v5363
  %6978 = vmatprep.subr.mxu0 0.0
  %6979 = vmatpush1.msra.mxu0 %v5364
  %6980 = vmatprep.subr.mxu0 0.0
  %6981 = vmatpush1.msra.mxu0 %v5365
  %6982 = vmatprep.subr.mxu0 0.0
  %6983 = vmatpush1.msra.mxu0 0.0
  %6984 = vmatprep.subr.mxu0 0.0
  %6985 = vmatpush1.msra.mxu0 0.0
  %6986 = vmatprep.subr.mxu0 0.0
  %6987 = vmatpush1.msra.mxu0 0.0
  %6988 = vmatprep.subr.mxu0 0.0
  %6989 = vmatpush1.msra.mxu0 0.0
  %6990 = vmatprep.subr.mxu0 0.0
  %6991 = vmatpush1.msra.mxu0 0.0
  %6992 = vmatprep.subr.mxu0 0.0
  %6993 = vmatpush1.msra.mxu0 0.0
  %6994 = vmatprep.subr.mxu0 0.0
  %6995 = vmatpush1.msra.mxu0 0.0
  %6996 = vmatprep.subr.mxu0 0.0
  %6997 = vmatpush1.msra.mxu0 0.0
  %6998 = vmatprep.subr.mxu0 0.0
  %6999 = vmatpush1.msra.mxu0 0.0
  %7000 = vmatprep.subr.mxu0 0.0
  %7001 = vmatpush1.msra.mxu0 0.0
  %7002 = vmatprep.subr.mxu0 0.0
  %7003 = vmatpush1.msra.mxu0 0.0
  %7004 = vmatprep.subr.mxu0 0.0
  %7005 = vmatpush1.msra.mxu0 0.0
  %7006 = vmatprep.subr.mxu0 0.0
  %7007 = vmatpush1.msra.mxu0 0.0
  %7008 = vmatprep.subr.mxu0 0.0
  %7009 = vmatpush1.msra.mxu0 0.0
  %7010 = vmatprep.subr.mxu0 0.0
  %7011 = vmatpush1.msra.mxu0 0.0
  %7012 = vmatprep.subr.mxu0 0.0
  %7013 = vmatpush1.msra.mxu0 0.0
  %7014 = vmatprep.subr.mxu0 0.0
  %7015 = vmatpush1.msra.mxu0 0.0
  %7016 = vmatprep.subr.mxu0 0.0
  %7017 = vmatpush1.msra.mxu0 0.0
  %7018 = vmatprep.subr.mxu0 0.0
  %7019 = vmatpush1.msra.mxu0 0.0
  %7020 = vmatprep.subr.mxu0 0.0
  %7021 = vmatpush1.msra.mxu0 0.0
  %7022 = vmatprep.subr.mxu0 0.0
  %7023 = vmatpush1.msra.mxu0 0.0
  %7024 = vmatprep.subr.mxu0 0.0
  %7025 = vmatpush1.msra.mxu0 0.0
  %7026 = vmatprep.subr.mxu0 0.0
  %7027 = vmatpush1.msra.mxu0 0.0
  %7028 = vmatprep.subr.mxu0 0.0
  %7029 = vmatpush1.msra.mxu0 0.0
  %7030 = vmatprep.subr.mxu0 0.0
  %7031 = vmatpush1.msra.mxu0 0.0
  %7032 = vmatprep.subr.mxu0 0.0
  %7033 = vmatpush1.msra.mxu0 0.0
  %7034 = vmatprep.subr.mxu0 0.0
  %7035 = vmatpush1.msra.mxu0 0.0
  %7036 = vmatprep.subr.mxu0 0.0
  %7037 = vmatpush1.msra.mxu0 0.0
  %7038 = vmatprep.mubr.f32.mxu0 0.0
  %7039 = vmatmul.mubr.f32.gmra.mrb[0].mxu0 %v6930
  %v7040 = vpop.f32.mrb[0].mxu0
  %v7041 = vadd.f32 0.0, %v7040
  %v7042 = vpop.f32.mrb[0].mxu0
  %7043 = vmatprep.mubr.f32.mxu0 0.0
  %7044 = vmatmul.mubr.f32.gmra.mrb[0].mxu0 %v6933
  %v7045 = vpop.f32.mrb[0].mxu0
  %v7046 = vadd.f32 0.0, %v7045
  %v7047 = vpop.f32.mrb[0].mxu0
  %7048 = vmatprep.mubr.f32.mxu0 0.0
  %7049 = vmatmul.mubr.f32.gmra.mrb[0].mxu0 %v6936
  %v7050 = vpop.f32.mrb[0].mxu0
  %v7051 = vadd.f32 0.0, %v7050
  %v7052 = vpop.f32.mrb[0].mxu0
  %7053 = vmatprep.mubr.f32.mxu0 0.0
  %7054 = vmatmul.mubr.f32.gmra.mrb[0].mxu0 %v6939
  %v7055 = vpop.f32.mrb[0].mxu0
  %v7056 = vadd.f32 0.0, %v7055
  %v7057 = vpop.f32.mrb[0].mxu0
  %7058 = vmatprep.mubr.f32.mxu0 0.0
  %7059 = vmatmul.mubr.f32.gmra.mrb[0].mxu0 %v6942
  %v7060 = vpop.f32.mrb[0].mxu0
  %v7061 = vadd.f32 0.0, %v7060
  %v7062 = vpop.f32.mrb[0].mxu0
  %7063 = vmatprep.mubr.f32.mxu0 0.0
  %7064 = vmatmul.mubr.f32.gmra.mrb[0].mxu0 %v6945
  %v7065 = vpop.f32.mrb[0].mxu0
  %v7066 = vadd.f32 0.0, %v7065
  %v7067 = vpop.f32.mrb[0].mxu0
  %7068 = vmatprep.mubr.f32.mxu0 0.0
  %7069 = vmatmul.mubr.f32.gmra.mrb[0].mxu0 %v6948
  %v7070 = vpop.f32.mrb[0].mxu0
  %v7071 = vadd.f32 0.0, %v7070
  %v7072 = vpop.f32.mrb[0].mxu0
  %7073 = vmatprep.mubr.f32.mxu0 0.0
  %7074 = vmatmul.mubr.f32.gmra.mrb[0].mxu0 %v6951
  %v7075 = vpop.f32.mrb[0].mxu0
  %v7076 = vpop.f32.mrb[0].mxu0
  %7077 = vmatprep.mubr.f32.mxu0 0.0
  %7078 = vmatmul.mubr.f32.gmra.mrb[0].mxu0 %v6954
  %v7079 = vpop.f32.mrb[0].mxu0
  %v7080 = vadd.f32 0.0, %v7079
  %v7081 = vpop.f32.mrb[0].mxu0
  %7082 = vmatprep.mubr.f32.mxu0 0.0
  %7083 = vmatmul.mubr.f32.gmra.mrb[0].mxu0 %v6957
  %v7084 = vpop.f32.mrb[0].mxu0
  %v7085 = vadd.f32 0.0, %v7084
  %v7086 = vpop.f32.mrb[0].mxu0
  %7087 = vmatprep.mubr.f32.mxu0 0.0
  %7088 = vmatmul.mubr.f32.gmra.mrb[0].mxu0 %v6960
  %v7089 = vpop.f32.mrb[0].mxu0
  %v7090 = vadd.f32 0.0, %v7089
  %v7091 = vpop.f32.mrb[0].mxu0
  %7092 = vmatprep.mubr.f32.mxu0 0.0
  %7093 = vmatmul.mubr.f32.gmra.mrb[0].mxu0 %v6963
  %v7094 = vpop.f32.mrb[0].mxu0
  %v7095 = vadd.f32 0.0, %v7094
  %v7096 = vpop.f32.mrb[0].mxu0
  %7097 = vmatprep.mubr.f32.mxu0 0.0
  %7098 = vmatmul.mubr.f32.gmra.mrb[0].mxu0 %v6966
  %v7099 = vpop.f32.mrb[0].mxu0
  %v7100 = vadd.f32 0.0, %v7099
  %v7101 = vpop.f32.mrb[0].mxu0
  %7102 = vmatprep.mubr.f32.mxu0 0.0
  %7103 = vmatmul.mubr.f32.gmra.mrb[0].mxu0 %v6969
  %v7104 = vpop.f32.mrb[0].mxu0
  %v7105 = vadd.f32 0.0, %v7104
  %v7106 = vpop.f32.mrb[0].mxu0
  %7107 = vmatprep.mubr.f32.mxu0 0.0
  %7108 = vmatmul.mubr.f32.gmra.mrb[0].mxu0 %v6972
  %v7109 = vpop.f32.mrb[0].mxu0
  %v7110 = vadd.f32 0.0, %v7109
  %v7111 = vpop.f32.mrb[0].mxu0
  %7112 = vdwg.mxu0
  %v7113 = vadd.f32 %v6900, %v7041
  %v7114 = vadd.f32 %v6901, %v7046
  %v7115 = vadd.f32 %v6902, %v7051
  %v7116 = vadd.f32 %v6903, %v7056
  %v7117 = vadd.f32 %v6904, %v7061
  %v7118 = vadd.f32 %v6905, %v7066
  %v7119 = vadd.f32 %v6906, %v7071
  %v7120 = vadd.f32 %v6907, %v7080
  %v7121 = vadd.f32 %v6908, %v7085
  %v7122 = vadd.f32 %v6909, %v7090
  %v7123 = vadd.f32 %v6910, %v7095
  %v7124 = vadd.f32 %v6911, %v7100
  %v7125 = vadd.f32 %v6912, %v7105
  %v7126 = vadd.f32 %v6913, %v7110
  %v7127 = vadd.f32 %v7113, %v5568
  %v7128 = vadd.f32 %v7114, %v5568
  %v7129 = vadd.f32 %v7115, %v5568
  %v7130 = vadd.f32 %v7116, %v5568
  %v7131 = vadd.f32 %v7117, %v5568
  %v7132 = vadd.f32 %v7118, %v5568
  %v7133 = vadd.f32 %v7119, %v5568
  %v7134 = vadd.f32 %v7120, %v5568
  %v7135 = vadd.f32 %v7121, %v5568
  %v7136 = vadd.f32 %v7122, %v5568
  %v7137 = vadd.f32 %v7123, %v5568
  %v7138 = vadd.f32 %v7124, %v5568
  %v7139 = vadd.f32 %v7125, %v5568
  %v7140 = vadd.f32 %v7126, %v5568
  %v7141 = vmax.f32 %v7127, 0.0
  %v7142 = vmax.f32 %v7128, 0.0
  %v7143 = vmax.f32 %v7129, 0.0
  %v7144 = vmax.f32 %v7130, 0.0
  %v7145 = vmax.f32 %v7131, 0.0
  %v7146 = vmax.f32 %v7132, 0.0
  %v7147 = vmax.f32 %v7133, 0.0
  %v7148 = vmax.f32 %v7134, 0.0
  %v7149 = vmax.f32 %v7135, 0.0
  %v7150 = vmax.f32 %v7136, 0.0
  %v7151 = vmax.f32 %v7137, 0.0
  %v7152 = vmax.f32 %v7138, 0.0
  %v7153 = vmax.f32 %v7139, 0.0
  %v7154 = vmax.f32 %v7140, 0.0
  %v7155 = vmax.f32 %v5584, %v7141
  %v7156 = vmax.f32 %v5585, %v7142
  %v7157 = vmax.f32 %v5586, %v7143
  %v7158 = vmax.f32 %v5587, %v7144
  %v7159 = vmax.f32 %v5588, %v7145
  %v7160 = vmax.f32 %v5589, %v7146
  %v7161 = vmax.f32 %v5590, %v7147
  %v7162 = vmax.f32 %v5591, %v7148
  %v7163 = vmax.f32 %v5592, %v7149
  %v7164 = vmax.f32 %v5593, %v7150
  %v7165 = vmax.f32 %v5594, %v7151
  %v7166 = vmax.f32 %v5595, %v7152
  %v7167 = vmax.f32 %v5596, %v7153
  %v7168 = vmax.f32 %v5597, %v7154
  %7169 = vmatprep.subr.mxu0 0.0
  %7170 = vmatpush1.msra.mxu0 %v3666
  %7171 = vmatprep.subr.mxu0 0.0
  %7172 = vmatpush1.msra.mxu0 %v3667
  %7173 = vmatprep.subr.mxu0 0.0
  %7174 = vmatpush1.msra.mxu0 %v3668
  %7175 = vmatprep.subr.mxu0 0.0
  %7176 = vmatpush1.msra.mxu0 %v3669
  %7177 = vmatprep.subr.mxu0 0.0
  %7178 = vmatpush1.msra.mxu0 0.0
  %7179 = vmatprep.subr.mxu0 0.0
  %7180 = vmatpush1.msra.mxu0 0.0
  %7181 = vmatprep.subr.mxu0 0.0
  %7182 = vmatpush1.msra.mxu0 0.0
  %7183 = vmatprep.subr.mxu0 0.0
  %7184 = vmatpush1.msra.mxu0 0.0
  %7185 = vmatprep.subr.mxu0 0.0
  %7186 = vmatpush1.msra.mxu0 0.0
  %7187 = vmatprep.subr.mxu0 0.0
  %7188 = vmatpush1.msra.mxu0 0.0
  %7189 = vmatprep.subr.mxu0 0.0
  %7190 = vmatpush1.msra.mxu0 0.0
  %7191 = vmatprep.subr.mxu0 0.0
  %7192 = vmatpush1.msra.mxu0 0.0
  %7193 = vmatprep.subr.mxu0 0.0
  %7194 = vmatpush1.msra.mxu0 0.0
  %7195 = vmatprep.subr.mxu0 0.0
  %7196 = vmatpush1.msra.mxu0 0.0
  %7197 = vmatprep.subr.mxu0 0.0
  %7198 = vmatpush1.msra.mxu0 0.0
  %7199 = vmatprep.subr.mxu0 0.0
  %7200 = vmatpush1.msra.mxu0 0.0
  %7201 = vmatprep.subr.mxu0 0.0
  %7202 = vmatpush1.msra.mxu0 0.0
  %7203 = vmatprep.subr.mxu0 0.0
  %7204 = vmatpush1.msra.mxu0 0.0
  %7205 = vmatprep.subr.mxu0 0.0
  %7206 = vmatpush1.msra.mxu0 0.0
  %7207 = vmatprep.subr.mxu0 0.0
  %7208 = vmatpush1.msra.mxu0 0.0
  %7209 = vmatprep.subr.mxu0 0.0
  %7210 = vmatpush1.msra.mxu0 0.0
  %7211 = vmatprep.subr.mxu0 0.0
  %7212 = vmatpush1.msra.mxu0 0.0
  %7213 = vmatprep.subr.mxu0 0.0
  %7214 = vmatpush1.msra.mxu0 0.0
  %7215 = vmatprep.subr.mxu0 0.0
  %7216 = vmatpush1.msra.mxu0 0.0
  %7217 = vmatprep.subr.mxu0 0.0
  %7218 = vmatpush1.msra.mxu0 0.0
  %7219 = vmatprep.subr.mxu0 0.0
  %7220 = vmatpush1.msra.mxu0 0.0
  %7221 = vmatprep.subr.mxu0 0.0
  %7222 = vmatpush1.msra.mxu0 0.0
  %7223 = vmatprep.subr.mxu0 0.0
  %7224 = vmatpush1.msra.mxu0 0.0
  %7225 = vmatprep.subr.mxu0 0.0
  %7226 = vmatpush1.msra.mxu0 0.0
  %7227 = vmatprep.subr.mxu0 0.0
  %7228 = vmatpush1.msra.mxu0 0.0
  %7229 = vmatprep.subr.mxu0 0.0
  %7230 = vmatpush1.msra.mxu0 0.0
  %7231 = vmatprep.subr.mxu0 0.0
  %7232 = vmatpush1.msra.mxu0 0.0
  %7233 = vmatprep.mubr.f32.mxu0 0.0
  %7234 = vmatmul.mubr.f32.gmra.mrb[0].mxu0 %v4495
  %v7235 = vpop.f32.mrb[0].mxu0
  %v7236 = vadd.f32 0.0, %v7235
  %v7237 = vpop.f32.mrb[0].mxu0
  %7238 = vmatprep.mubr.f32.mxu0 0.0
  %7239 = vmatmul.mubr.f32.gmra.mrb[0].mxu0 %v4498
  %v7240 = vpop.f32.mrb[0].mxu0
  %v7241 = vadd.f32 0.0, %v7240
  %v7242 = vpop.f32.mrb[0].mxu0
  %7243 = vmatprep.mubr.f32.mxu0 0.0
  %7244 = vmatmul.mubr.f32.gmra.mrb[0].mxu0 %v4501
  %v7245 = vpop.f32.mrb[0].mxu0
  %v7246 = vadd.f32 0.0, %v7245
  %v7247 = vpop.f32.mrb[0].mxu0
  %7248 = vmatprep.mubr.f32.mxu0 0.0
  %7249 = vmatmul.mubr.f32.gmra.mrb[0].mxu0 %v4504
  %v7250 = vpop.f32.mrb[0].mxu0
  %v7251 = vadd.f32 0.0, %v7250
  %v7252 = vpop.f32.mrb[0].mxu0
  %7253 = vmatprep.mubr.f32.mxu0 0.0
  %7254 = vmatmul.mubr.f32.gmra.mrb[0].mxu0 %v4507
  %v7255 = vpop.f32.mrb[0].mxu0
  %v7256 = vadd.f32 0.0, %v7255
  %v7257 = vpop.f32.mrb[0].mxu0
  %7258 = vmatprep.mubr.f32.mxu0 0.0
  %7259 = vmatmul.mubr.f32.gmra.mrb[0].mxu0 %v4510
  %v7260 = vpop.f32.mrb[0].mxu0
  %v7261 = vadd.f32 0.0, %v7260
  %v7262 = vpop.f32.mrb[0].mxu0
  %7263 = vmatprep.mubr.f32.mxu0 0.0
  %7264 = vmatmul.mubr.f32.gmra.mrb[0].mxu0 %v4513
  %v7265 = vpop.f32.mrb[0].mxu0
  %v7266 = vadd.f32 0.0, %v7265
  %v7267 = vpop.f32.mrb[0].mxu0
  %7268 = vmatprep.mubr.f32.mxu0 0.0
  %7269 = vmatmul.mubr.f32.gmra.mrb[0].mxu0 %v4516
  %v7270 = vpop.f32.mrb[0].mxu0
  %v7271 = vpop.f32.mrb[0].mxu0
  %7272 = vmatprep.mubr.f32.mxu0 0.0
  %7273 = vmatmul.mubr.f32.gmra.mrb[0].mxu0 %v4519
  %v7274 = vpop.f32.mrb[0].mxu0
  %v7275 = vadd.f32 0.0, %v7274
  %v7276 = vpop.f32.mrb[0].mxu0
  %7277 = vmatprep.mubr.f32.mxu0 0.0
  %7278 = vmatmul.mubr.f32.gmra.mrb[0].mxu0 %v4522
  %v7279 = vpop.f32.mrb[0].mxu0
  %v7280 = vadd.f32 0.0, %v7279
  %v7281 = vpop.f32.mrb[0].mxu0
  %7282 = vmatprep.mubr.f32.mxu0 0.0
  %7283 = vmatmul.mubr.f32.gmra.mrb[0].mxu0 %v4525
  %v7284 = vpop.f32.mrb[0].mxu0
  %v7285 = vadd.f32 0.0, %v7284
  %v7286 = vpop.f32.mrb[0].mxu0
  %7287 = vmatprep.mubr.f32.mxu0 0.0
  %7288 = vmatmul.mubr.f32.gmra.mrb[0].mxu0 %v4528
  %v7289 = vpop.f32.mrb[0].mxu0
  %v7290 = vadd.f32 0.0, %v7289
  %v7291 = vpop.f32.mrb[0].mxu0
  %7292 = vmatprep.mubr.f32.mxu0 0.0
  %7293 = vmatmul.mubr.f32.gmra.mrb[0].mxu0 %v4531
  %v7294 = vpop.f32.mrb[0].mxu0
  %v7295 = vadd.f32 0.0, %v7294
  %v7296 = vpop.f32.mrb[0].mxu0
  %7297 = vmatprep.mubr.f32.mxu0 0.0
  %7298 = vmatmul.mubr.f32.gmra.mrb[0].mxu0 %v4534
  %v7299 = vpop.f32.mrb[0].mxu0
  %v7300 = vadd.f32 0.0, %v7299
  %v7301 = vpop.f32.mrb[0].mxu0
  %7302 = vmatprep.mubr.f32.mxu0 0.0
  %7303 = vmatmul.mubr.f32.gmra.mrb[0].mxu0 %v4537
  %v7304 = vpop.f32.mrb[0].mxu0
  %v7305 = vadd.f32 0.0, %v7304
  %v7306 = vpop.f32.mrb[0].mxu0
  %7307 = vdwg.mxu0
  %7308 = vmatprep.subr.mxu0 0.0
  %7309 = vmatpush1.msra.mxu0 %v3646
  %7310 = vmatprep.subr.mxu0 0.0
  %7311 = vmatpush1.msra.mxu0 %v3647
  %7312 = vmatprep.subr.mxu0 0.0
  %7313 = vmatpush1.msra.mxu0 %v3648
  %7314 = vmatprep.subr.mxu0 0.0
  %7315 = vmatpush1.msra.mxu0 %v3649
  %7316 = vmatprep.subr.mxu0 0.0
  %7317 = vmatpush1.msra.mxu0 0.0
  %7318 = vmatprep.subr.mxu0 0.0
  %7319 = vmatpush1.msra.mxu0 0.0
  %7320 = vmatprep.subr.mxu0 0.0
  %7321 = vmatpush1.msra.mxu0 0.0
  %7322 = vmatprep.subr.mxu0 0.0
  %7323 = vmatpush1.msra.mxu0 0.0
  %7324 = vmatprep.subr.mxu0 0.0
  %7325 = vmatpush1.msra.mxu0 0.0
  %7326 = vmatprep.subr.mxu0 0.0
  %7327 = vmatpush1.msra.mxu0 0.0
  %7328 = vmatprep.subr.mxu0 0.0
  %7329 = vmatpush1.msra.mxu0 0.0
  %7330 = vmatprep.subr.mxu0 0.0
  %7331 = vmatpush1.msra.mxu0 0.0
  %7332 = vmatprep.subr.mxu0 0.0
  %7333 = vmatpush1.msra.mxu0 0.0
  %7334 = vmatprep.subr.mxu0 0.0
  %7335 = vmatpush1.msra.mxu0 0.0
  %7336 = vmatprep.subr.mxu0 0.0
  %7337 = vmatpush1.msra.mxu0 0.0
  %7338 = vmatprep.subr.mxu0 0.0
  %7339 = vmatpush1.msra.mxu0 0.0
  %7340 = vmatprep.subr.mxu0 0.0
  %7341 = vmatpush1.msra.mxu0 0.0
  %7342 = vmatprep.subr.mxu0 0.0
  %7343 = vmatpush1.msra.mxu0 0.0
  %7344 = vmatprep.subr.mxu0 0.0
  %7345 = vmatpush1.msra.mxu0 0.0
  %7346 = vmatprep.subr.mxu0 0.0
  %7347 = vmatpush1.msra.mxu0 0.0
  %7348 = vmatprep.subr.mxu0 0.0
  %7349 = vmatpush1.msra.mxu0 0.0
  %7350 = vmatprep.subr.mxu0 0.0
  %7351 = vmatpush1.msra.mxu0 0.0
  %7352 = vmatprep.subr.mxu0 0.0
  %7353 = vmatpush1.msra.mxu0 0.0
  %7354 = vmatprep.subr.mxu0 0.0
  %7355 = vmatpush1.msra.mxu0 0.0
  %7356 = vmatprep.subr.mxu0 0.0
  %7357 = vmatpush1.msra.mxu0 0.0
  %7358 = vmatprep.subr.mxu0 0.0
  %7359 = vmatpush1.msra.mxu0 0.0
  %7360 = vmatprep.subr.mxu0 0.0
  %7361 = vmatpush1.msra.mxu0 0.0
  %7362 = vmatprep.subr.mxu0 0.0
  %7363 = vmatpush1.msra.mxu0 0.0
  %7364 = vmatprep.subr.mxu0 0.0
  %7365 = vmatpush1.msra.mxu0 0.0
  %7366 = vmatprep.subr.mxu0 0.0
  %7367 = vmatpush1.msra.mxu0 0.0
  %7368 = vmatprep.subr.mxu0 0.0
  %7369 = vmatpush1.msra.mxu0 0.0
  %7370 = vmatprep.subr.mxu0 0.0
  %7371 = vmatpush1.msra.mxu0 0.0
  %7372 = vmatprep.mubr.f32.mxu0 0.0
  %7373 = vmatmul.mubr.f32.gmra.mrb[0].mxu0 %v4277
  %v7374 = vpop.f32.mrb[0].mxu0
  %v7375 = vadd.f32 %v7236, %v7374
  %v7376 = vpop.f32.mrb[0].mxu0
  %7377 = vmatprep.mubr.f32.mxu0 0.0
  %7378 = vmatmul.mubr.f32.gmra.mrb[0].mxu0 %v4280
  %v7379 = vpop.f32.mrb[0].mxu0
  %v7380 = vadd.f32 %v7241, %v7379
  %v7381 = vpop.f32.mrb[0].mxu0
  %7382 = vmatprep.mubr.f32.mxu0 0.0
  %7383 = vmatmul.mubr.f32.gmra.mrb[0].mxu0 %v4283
  %v7384 = vpop.f32.mrb[0].mxu0
  %v7385 = vadd.f32 %v7246, %v7384
  %v7386 = vpop.f32.mrb[0].mxu0
  %7387 = vmatprep.mubr.f32.mxu0 0.0
  %7388 = vmatmul.mubr.f32.gmra.mrb[0].mxu0 %v4286
  %v7389 = vpop.f32.mrb[0].mxu0
  %v7390 = vadd.f32 %v7251, %v7389
  %v7391 = vpop.f32.mrb[0].mxu0
  %7392 = vmatprep.mubr.f32.mxu0 0.0
  %7393 = vmatmul.mubr.f32.gmra.mrb[0].mxu0 %v4289
  %v7394 = vpop.f32.mrb[0].mxu0
  %v7395 = vadd.f32 %v7256, %v7394
  %v7396 = vpop.f32.mrb[0].mxu0
  %7397 = vmatprep.mubr.f32.mxu0 0.0
  %7398 = vmatmul.mubr.f32.gmra.mrb[0].mxu0 %v4292
  %v7399 = vpop.f32.mrb[0].mxu0
  %v7400 = vadd.f32 %v7261, %v7399
  %v7401 = vpop.f32.mrb[0].mxu0
  %7402 = vmatprep.mubr.f32.mxu0 0.0
  %7403 = vmatmul.mubr.f32.gmra.mrb[0].mxu0 %v4295
  %v7404 = vpop.f32.mrb[0].mxu0
  %v7405 = vadd.f32 %v7266, %v7404
  %v7406 = vpop.f32.mrb[0].mxu0
  %7407 = vmatprep.mubr.f32.mxu0 0.0
  %7408 = vmatmul.mubr.f32.gmra.mrb[0].mxu0 %v4298
  %v7409 = vpop.f32.mrb[0].mxu0
  %v7410 = vpop.f32.mrb[0].mxu0
  %7411 = vmatprep.mubr.f32.mxu0 0.0
  %7412 = vmatmul.mubr.f32.gmra.mrb[0].mxu0 %v4301
  %v7413 = vpop.f32.mrb[0].mxu0
  %v7414 = vadd.f32 %v7275, %v7413
  %v7415 = vpop.f32.mrb[0].mxu0
  %7416 = vmatprep.mubr.f32.mxu0 0.0
  %7417 = vmatmul.mubr.f32.gmra.mrb[0].mxu0 %v4304
  %v7418 = vpop.f32.mrb[0].mxu0
  %v7419 = vadd.f32 %v7280, %v7418
  %v7420 = vpop.f32.mrb[0].mxu0
  %7421 = vmatprep.mubr.f32.mxu0 0.0
  %7422 = vmatmul.mubr.f32.gmra.mrb[0].mxu0 %v4307
  %v7423 = vpop.f32.mrb[0].mxu0
  %v7424 = vadd.f32 %v7285, %v7423
  %v7425 = vpop.f32.mrb[0].mxu0
  %7426 = vmatprep.mubr.f32.mxu0 0.0
  %7427 = vmatmul.mubr.f32.gmra.mrb[0].mxu0 %v4310
  %v7428 = vpop.f32.mrb[0].mxu0
  %v7429 = vadd.f32 %v7290, %v7428
  %v7430 = vpop.f32.mrb[0].mxu0
  %7431 = vmatprep.mubr.f32.mxu0 0.0
  %7432 = vmatmul.mubr.f32.gmra.mrb[0].mxu0 %v4313
  %v7433 = vpop.f32.mrb[0].mxu0
  %v7434 = vadd.f32 %v7295, %v7433
  %v7435 = vpop.f32.mrb[0].mxu0
  %7436 = vmatprep.mubr.f32.mxu0 0.0
  %7437 = vmatmul.mubr.f32.gmra.mrb[0].mxu0 %v4316
  %v7438 = vpop.f32.mrb[0].mxu0
  %v7439 = vadd.f32 %v7300, %v7438
  %v7440 = vpop.f32.mrb[0].mxu0
  %7441 = vmatprep.mubr.f32.mxu0 0.0
  %7442 = vmatmul.mubr.f32.gmra.mrb[0].mxu0 %v4319
  %v7443 = vpop.f32.mrb[0].mxu0
  %v7444 = vadd.f32 %v7305, %v7443
  %v7445 = vpop.f32.mrb[0].mxu0
  %7446 = vdwg.mxu0
  %7447 = vmatprep.subr.mxu0 0.0
  %7448 = vmatpush1.msra.mxu0 %v4054
  %7449 = vmatprep.subr.mxu0 0.0
  %7450 = vmatpush1.msra.mxu0 %v4055
  %7451 = vmatprep.subr.mxu0 0.0
  %7452 = vmatpush1.msra.mxu0 %v4056
  %7453 = vmatprep.subr.mxu0 0.0
  %7454 = vmatpush1.msra.mxu0 %v4057
  %7455 = vmatprep.subr.mxu0 0.0
  %7456 = vmatpush1.msra.mxu0 0.0
  %7457 = vmatprep.subr.mxu0 0.0
  %7458 = vmatpush1.msra.mxu0 0.0
  %7459 = vmatprep.subr.mxu0 0.0
  %7460 = vmatpush1.msra.mxu0 0.0
  %7461 = vmatprep.subr.mxu0 0.0
  %7462 = vmatpush1.msra.mxu0 0.0
  %7463 = vmatprep.subr.mxu0 0.0
  %7464 = vmatpush1.msra.mxu0 0.0
  %7465 = vmatprep.subr.mxu0 0.0
  %7466 = vmatpush1.msra.mxu0 0.0
  %7467 = vmatprep.subr.mxu0 0.0
  %7468 = vmatpush1.msra.mxu0 0.0
  %7469 = vmatprep.subr.mxu0 0.0
  %7470 = vmatpush1.msra.mxu0 0.0
  %7471 = vmatprep.subr.mxu0 0.0
  %7472 = vmatpush1.msra.mxu0 0.0
  %7473 = vmatprep.subr.mxu0 0.0
  %7474 = vmatpush1.msra.mxu0 0.0
  %7475 = vmatprep.subr.mxu0 0.0
  %7476 = vmatpush1.msra.mxu0 0.0
  %7477 = vmatprep.subr.mxu0 0.0
  %7478 = vmatpush1.msra.mxu0 0.0
  %7479 = vmatprep.subr.mxu0 0.0
  %7480 = vmatpush1.msra.mxu0 0.0
  %7481 = vmatprep.subr.mxu0 0.0
  %7482 = vmatpush1.msra.mxu0 0.0
  %7483 = vmatprep.subr.mxu0 0.0
  %7484 = vmatpush1.msra.mxu0 0.0
  %7485 = vmatprep.subr.mxu0 0.0
  %7486 = vmatpush1.msra.mxu0 0.0
  %7487 = vmatprep.subr.mxu0 0.0
  %7488 = vmatpush1.msra.mxu0 0.0
  %7489 = vmatprep.subr.mxu0 0.0
  %7490 = vmatpush1.msra.mxu0 0.0
  %7491 = vmatprep.subr.mxu0 0.0
  %7492 = vmatpush1.msra.mxu0 0.0
  %7493 = vmatprep.subr.mxu0 0.0
  %7494 = vmatpush1.msra.mxu0 0.0
  %7495 = vmatprep.subr.mxu0 0.0
  %7496 = vmatpush1.msra.mxu0 0.0
  %7497 = vmatprep.subr.mxu0 0.0
  %7498 = vmatpush1.msra.mxu0 0.0
  %7499 = vmatprep.subr.mxu0 0.0
  %7500 = vmatpush1.msra.mxu0 0.0
  %7501 = vmatprep.subr.mxu0 0.0
  %7502 = vmatpush1.msra.mxu0 0.0
  %7503 = vmatprep.subr.mxu0 0.0
  %7504 = vmatpush1.msra.mxu0 0.0
  %7505 = vmatprep.subr.mxu0 0.0
  %7506 = vmatpush1.msra.mxu0 0.0
  %7507 = vmatprep.subr.mxu0 0.0
  %7508 = vmatpush1.msra.mxu0 0.0
  %7509 = vmatprep.subr.mxu0 0.0
  %7510 = vmatpush1.msra.mxu0 0.0
  %7511 = vmatprep.mubr.f32.mxu0 0.0
  %7512 = vmatmul.mubr.f32.gmra.mrb[0].mxu0 %v4713
  %v7513 = vpop.f32.mrb[0].mxu0
  %v7514 = vadd.f32 0.0, %v7513
  %v7515 = vpop.f32.mrb[0].mxu0
  %7516 = vmatprep.mubr.f32.mxu0 0.0
  %7517 = vmatmul.mubr.f32.gmra.mrb[0].mxu0 %v4716
  %v7518 = vpop.f32.mrb[0].mxu0
  %v7519 = vadd.f32 0.0, %v7518
  %v7520 = vpop.f32.mrb[0].mxu0
  %7521 = vmatprep.mubr.f32.mxu0 0.0
  %7522 = vmatmul.mubr.f32.gmra.mrb[0].mxu0 %v4719
  %v7523 = vpop.f32.mrb[0].mxu0
  %v7524 = vadd.f32 0.0, %v7523
  %v7525 = vpop.f32.mrb[0].mxu0
  %7526 = vmatprep.mubr.f32.mxu0 0.0
  %7527 = vmatmul.mubr.f32.gmra.mrb[0].mxu0 %v4722
  %v7528 = vpop.f32.mrb[0].mxu0
  %v7529 = vadd.f32 0.0, %v7528
  %v7530 = vpop.f32.mrb[0].mxu0
  %7531 = vmatprep.mubr.f32.mxu0 0.0
  %7532 = vmatmul.mubr.f32.gmra.mrb[0].mxu0 %v4725
  %v7533 = vpop.f32.mrb[0].mxu0
  %v7534 = vadd.f32 0.0, %v7533
  %v7535 = vpop.f32.mrb[0].mxu0
  %7536 = vmatprep.mubr.f32.mxu0 0.0
  %7537 = vmatmul.mubr.f32.gmra.mrb[0].mxu0 %v4728
  %v7538 = vpop.f32.mrb[0].mxu0
  %v7539 = vadd.f32 0.0, %v7538
  %v7540 = vpop.f32.mrb[0].mxu0
  %7541 = vmatprep.mubr.f32.mxu0 0.0
  %7542 = vmatmul.mubr.f32.gmra.mrb[0].mxu0 %v4731
  %v7543 = vpop.f32.mrb[0].mxu0
  %v7544 = vadd.f32 0.0, %v7543
  %v7545 = vpop.f32.mrb[0].mxu0
  %7546 = vmatprep.mubr.f32.mxu0 0.0
  %7547 = vmatmul.mubr.f32.gmra.mrb[0].mxu0 %v4734
  %v7548 = vpop.f32.mrb[0].mxu0
  %v7549 = vpop.f32.mrb[0].mxu0
  %7550 = vmatprep.mubr.f32.mxu0 0.0
  %7551 = vmatmul.mubr.f32.gmra.mrb[0].mxu0 %v4737
  %v7552 = vpop.f32.mrb[0].mxu0
  %v7553 = vadd.f32 0.0, %v7552
  %v7554 = vpop.f32.mrb[0].mxu0
  %7555 = vmatprep.mubr.f32.mxu0 0.0
  %7556 = vmatmul.mubr.f32.gmra.mrb[0].mxu0 %v4740
  %v7557 = vpop.f32.mrb[0].mxu0
  %v7558 = vadd.f32 0.0, %v7557
  %v7559 = vpop.f32.mrb[0].mxu0
  %7560 = vmatprep.mubr.f32.mxu0 0.0
  %7561 = vmatmul.mubr.f32.gmra.mrb[0].mxu0 %v4743
  %v7562 = vpop.f32.mrb[0].mxu0
  %v7563 = vadd.f32 0.0, %v7562
  %v7564 = vpop.f32.mrb[0].mxu0
  %7565 = vmatprep.mubr.f32.mxu0 0.0
  %7566 = vmatmul.mubr.f32.gmra.mrb[0].mxu0 %v4746
  %v7567 = vpop.f32.mrb[0].mxu0
  %v7568 = vadd.f32 0.0, %v7567
  %v7569 = vpop.f32.mrb[0].mxu0
  %7570 = vmatprep.mubr.f32.mxu0 0.0
  %7571 = vmatmul.mubr.f32.gmra.mrb[0].mxu0 %v4749
  %v7572 = vpop.f32.mrb[0].mxu0
  %v7573 = vadd.f32 0.0, %v7572
  %v7574 = vpop.f32.mrb[0].mxu0
  %7575 = vmatprep.mubr.f32.mxu0 0.0
  %7576 = vmatmul.mubr.f32.gmra.mrb[0].mxu0 %v4752
  %v7577 = vpop.f32.mrb[0].mxu0
  %v7578 = vadd.f32 0.0, %v7577
  %v7579 = vpop.f32.mrb[0].mxu0
  %7580 = vmatprep.mubr.f32.mxu0 0.0
  %7581 = vmatmul.mubr.f32.gmra.mrb[0].mxu0 %v4755
  %v7582 = vpop.f32.mrb[0].mxu0
  %v7583 = vadd.f32 0.0, %v7582
  %v7584 = vpop.f32.mrb[0].mxu0
  %7585 = vdwg.mxu0
  %v7586 = vadd.f32 %v7375, %v7514
  %v7587 = vadd.f32 %v7380, %v7519
  %v7588 = vadd.f32 %v7385, %v7524
  %v7589 = vadd.f32 %v7390, %v7529
  %v7590 = vadd.f32 %v7395, %v7534
  %v7591 = vadd.f32 %v7400, %v7539
  %v7592 = vadd.f32 %v7405, %v7544
  %v7593 = vadd.f32 %v7414, %v7553
  %v7594 = vadd.f32 %v7419, %v7558
  %v7595 = vadd.f32 %v7424, %v7563
  %v7596 = vadd.f32 %v7429, %v7568
  %v7597 = vadd.f32 %v7434, %v7573
  %v7598 = vadd.f32 %v7439, %v7578
  %v7599 = vadd.f32 %v7444, %v7583
  %7600 = vmatprep.subr.mxu0 0.0
  %7601 = vmatpush1.msra.mxu0 %v4272
  %7602 = vmatprep.subr.mxu0 0.0
  %7603 = vmatpush1.msra.mxu0 %v4273
  %7604 = vmatprep.subr.mxu0 0.0
  %7605 = vmatpush1.msra.mxu0 %v4274
  %7606 = vmatprep.subr.mxu0 0.0
  %7607 = vmatpush1.msra.mxu0 %v4275
  %7608 = vmatprep.subr.mxu0 0.0
  %7609 = vmatpush1.msra.mxu0 0.0
  %7610 = vmatprep.subr.mxu0 0.0
  %7611 = vmatpush1.msra.mxu0 0.0
  %7612 = vmatprep.subr.mxu0 0.0
  %7613 = vmatpush1.msra.mxu0 0.0
  %7614 = vmatprep.subr.mxu0 0.0
  %7615 = vmatpush1.msra.mxu0 0.0
  %7616 = vmatprep.subr.mxu0 0.0
  %7617 = vmatpush1.msra.mxu0 0.0
  %7618 = vmatprep.subr.mxu0 0.0
  %7619 = vmatpush1.msra.mxu0 0.0
  %7620 = vmatprep.subr.mxu0 0.0
  %7621 = vmatpush1.msra.mxu0 0.0
  %7622 = vmatprep.subr.mxu0 0.0
  %7623 = vmatpush1.msra.mxu0 0.0
  %7624 = vmatprep.subr.mxu0 0.0
  %7625 = vmatpush1.msra.mxu0 0.0
  %7626 = vmatprep.subr.mxu0 0.0
  %7627 = vmatpush1.msra.mxu0 0.0
  %7628 = vmatprep.subr.mxu0 0.0
  %7629 = vmatpush1.msra.mxu0 0.0
  %7630 = vmatprep.subr.mxu0 0.0
  %7631 = vmatpush1.msra.mxu0 0.0
  %7632 = vmatprep.subr.mxu0 0.0
  %7633 = vmatpush1.msra.mxu0 0.0
  %7634 = vmatprep.subr.mxu0 0.0
  %7635 = vmatpush1.msra.mxu0 0.0
  %7636 = vmatprep.subr.mxu0 0.0
  %7637 = vmatpush1.msra.mxu0 0.0
  %7638 = vmatprep.subr.mxu0 0.0
  %7639 = vmatpush1.msra.mxu0 0.0
  %7640 = vmatprep.subr.mxu0 0.0
  %7641 = vmatpush1.msra.mxu0 0.0
  %7642 = vmatprep.subr.mxu0 0.0
  %7643 = vmatpush1.msra.mxu0 0.0
  %7644 = vmatprep.subr.mxu0 0.0
  %7645 = vmatpush1.msra.mxu0 0.0
  %7646 = vmatprep.subr.mxu0 0.0
  %7647 = vmatpush1.msra.mxu0 0.0
  %7648 = vmatprep.subr.mxu0 0.0
  %7649 = vmatpush1.msra.mxu0 0.0
  %7650 = vmatprep.subr.mxu0 0.0
  %7651 = vmatpush1.msra.mxu0 0.0
  %7652 = vmatprep.subr.mxu0 0.0
  %7653 = vmatpush1.msra.mxu0 0.0
  %7654 = vmatprep.subr.mxu0 0.0
  %7655 = vmatpush1.msra.mxu0 0.0
  %7656 = vmatprep.subr.mxu0 0.0
  %7657 = vmatpush1.msra.mxu0 0.0
  %7658 = vmatprep.subr.mxu0 0.0
  %7659 = vmatpush1.msra.mxu0 0.0
  %7660 = vmatprep.subr.mxu0 0.0
  %7661 = vmatpush1.msra.mxu0 0.0
  %7662 = vmatprep.subr.mxu0 0.0
  %7663 = vmatpush1.msra.mxu0 0.0
  %7664 = vmatprep.mubr.f32.mxu0 0.0
  %7665 = vmatmul.mubr.f32.gmra.mrb[0].mxu0 %v4931
  %v7666 = vpop.f32.mrb[0].mxu0
  %v7667 = vadd.f32 0.0, %v7666
  %v7668 = vpop.f32.mrb[0].mxu0
  %7669 = vmatprep.mubr.f32.mxu0 0.0
  %7670 = vmatmul.mubr.f32.gmra.mrb[0].mxu0 %v4934
  %v7671 = vpop.f32.mrb[0].mxu0
  %v7672 = vadd.f32 0.0, %v7671
  %v7673 = vpop.f32.mrb[0].mxu0
  %7674 = vmatprep.mubr.f32.mxu0 0.0
  %7675 = vmatmul.mubr.f32.gmra.mrb[0].mxu0 %v4937
  %v7676 = vpop.f32.mrb[0].mxu0
  %v7677 = vadd.f32 0.0, %v7676
  %v7678 = vpop.f32.mrb[0].mxu0
  %7679 = vmatprep.mubr.f32.mxu0 0.0
  %7680 = vmatmul.mubr.f32.gmra.mrb[0].mxu0 %v4940
  %v7681 = vpop.f32.mrb[0].mxu0
  %v7682 = vadd.f32 0.0, %v7681
  %v7683 = vpop.f32.mrb[0].mxu0
  %7684 = vmatprep.mubr.f32.mxu0 0.0
  %7685 = vmatmul.mubr.f32.gmra.mrb[0].mxu0 %v4943
  %v7686 = vpop.f32.mrb[0].mxu0
  %v7687 = vadd.f32 0.0, %v7686
  %v7688 = vpop.f32.mrb[0].mxu0
  %7689 = vmatprep.mubr.f32.mxu0 0.0
  %7690 = vmatmul.mubr.f32.gmra.mrb[0].mxu0 %v4946
  %v7691 = vpop.f32.mrb[0].mxu0
  %v7692 = vadd.f32 0.0, %v7691
  %v7693 = vpop.f32.mrb[0].mxu0
  %7694 = vmatprep.mubr.f32.mxu0 0.0
  %7695 = vmatmul.mubr.f32.gmra.mrb[0].mxu0 %v4949
  %v7696 = vpop.f32.mrb[0].mxu0
  %v7697 = vadd.f32 0.0, %v7696
  %v7698 = vpop.f32.mrb[0].mxu0
  %7699 = vmatprep.mubr.f32.mxu0 0.0
  %7700 = vmatmul.mubr.f32.gmra.mrb[0].mxu0 %v4952
  %v7701 = vpop.f32.mrb[0].mxu0
  %v7702 = vpop.f32.mrb[0].mxu0
  %7703 = vmatprep.mubr.f32.mxu0 0.0
  %7704 = vmatmul.mubr.f32.gmra.mrb[0].mxu0 %v4955
  %v7705 = vpop.f32.mrb[0].mxu0
  %v7706 = vadd.f32 0.0, %v7705
  %v7707 = vpop.f32.mrb[0].mxu0
  %7708 = vmatprep.mubr.f32.mxu0 0.0
  %7709 = vmatmul.mubr.f32.gmra.mrb[0].mxu0 %v4958
  %v7710 = vpop.f32.mrb[0].mxu0
  %v7711 = vadd.f32 0.0, %v7710
  %v7712 = vpop.f32.mrb[0].mxu0
  %7713 = vmatprep.mubr.f32.mxu0 0.0
  %7714 = vmatmul.mubr.f32.gmra.mrb[0].mxu0 %v4961
  %v7715 = vpop.f32.mrb[0].mxu0
  %v7716 = vadd.f32 0.0, %v7715
  %v7717 = vpop.f32.mrb[0].mxu0
  %7718 = vmatprep.mubr.f32.mxu0 0.0
  %7719 = vmatmul.mubr.f32.gmra.mrb[0].mxu0 %v4964
  %v7720 = vpop.f32.mrb[0].mxu0
  %v7721 = vadd.f32 0.0, %v7720
  %v7722 = vpop.f32.mrb[0].mxu0
  %7723 = vmatprep.mubr.f32.mxu0 0.0
  %7724 = vmatmul.mubr.f32.gmra.mrb[0].mxu0 %v4967
  %v7725 = vpop.f32.mrb[0].mxu0
  %v7726 = vadd.f32 0.0, %v7725
  %v7727 = vpop.f32.mrb[0].mxu0
  %7728 = vmatprep.mubr.f32.mxu0 0.0
  %7729 = vmatmul.mubr.f32.gmra.mrb[0].mxu0 %v4970
  %v7730 = vpop.f32.mrb[0].mxu0
  %v7731 = vadd.f32 0.0, %v7730
  %v7732 = vpop.f32.mrb[0].mxu0
  %7733 = vmatprep.mubr.f32.mxu0 0.0
  %7734 = vmatmul.mubr.f32.gmra.mrb[0].mxu0 %v4973
  %v7735 = vpop.f32.mrb[0].mxu0
  %v7736 = vadd.f32 0.0, %v7735
  %v7737 = vpop.f32.mrb[0].mxu0
  %7738 = vdwg.mxu0
  %v7739 = vadd.f32 %v7586, %v7667
  %v7740 = vadd.f32 %v7587, %v7672
  %v7741 = vadd.f32 %v7588, %v7677
  %v7742 = vadd.f32 %v7589, %v7682
  %v7743 = vadd.f32 %v7590, %v7687
  %v7744 = vadd.f32 %v7591, %v7692
  %v7745 = vadd.f32 %v7592, %v7697
  %v7746 = vadd.f32 %v7593, %v7706
  %v7747 = vadd.f32 %v7594, %v7711
  %v7748 = vadd.f32 %v7595, %v7716
  %v7749 = vadd.f32 %v7596, %v7721
  %v7750 = vadd.f32 %v7597, %v7726
  %v7751 = vadd.f32 %v7598, %v7731
  %v7752 = vadd.f32 %v7599, %v7736
  %7753 = vmatprep.subr.mxu0 0.0
  %7754 = vmatpush1.msra.mxu0 %v4490
  %7755 = vmatprep.subr.mxu0 0.0
  %7756 = vmatpush1.msra.mxu0 %v4491
  %7757 = vmatprep.subr.mxu0 0.0
  %7758 = vmatpush1.msra.mxu0 %v4492
  %7759 = vmatprep.subr.mxu0 0.0
  %7760 = vmatpush1.msra.mxu0 %v4493
  %7761 = vmatprep.subr.mxu0 0.0
  %7762 = vmatpush1.msra.mxu0 0.0
  %7763 = vmatprep.subr.mxu0 0.0
  %7764 = vmatpush1.msra.mxu0 0.0
  %7765 = vmatprep.subr.mxu0 0.0
  %7766 = vmatpush1.msra.mxu0 0.0
  %7767 = vmatprep.subr.mxu0 0.0
  %7768 = vmatpush1.msra.mxu0 0.0
  %7769 = vmatprep.subr.mxu0 0.0
  %7770 = vmatpush1.msra.mxu0 0.0
  %7771 = vmatprep.subr.mxu0 0.0
  %7772 = vmatpush1.msra.mxu0 0.0
  %7773 = vmatprep.subr.mxu0 0.0
  %7774 = vmatpush1.msra.mxu0 0.0
  %7775 = vmatprep.subr.mxu0 0.0
  %7776 = vmatpush1.msra.mxu0 0.0
  %7777 = vmatprep.subr.mxu0 0.0
  %7778 = vmatpush1.msra.mxu0 0.0
  %7779 = vmatprep.subr.mxu0 0.0
  %7780 = vmatpush1.msra.mxu0 0.0
  %7781 = vmatprep.subr.mxu0 0.0
  %7782 = vmatpush1.msra.mxu0 0.0
  %7783 = vmatprep.subr.mxu0 0.0
  %7784 = vmatpush1.msra.mxu0 0.0
  %7785 = vmatprep.subr.mxu0 0.0
  %7786 = vmatpush1.msra.mxu0 0.0
  %7787 = vmatprep.subr.mxu0 0.0
  %7788 = vmatpush1.msra.mxu0 0.0
  %7789 = vmatprep.subr.mxu0 0.0
  %7790 = vmatpush1.msra.mxu0 0.0
  %7791 = vmatprep.subr.mxu0 0.0
  %7792 = vmatpush1.msra.mxu0 0.0
  %7793 = vmatprep.subr.mxu0 0.0
  %7794 = vmatpush1.msra.mxu0 0.0
  %7795 = vmatprep.subr.mxu0 0.0
  %7796 = vmatpush1.msra.mxu0 0.0
  %7797 = vmatprep.subr.mxu0 0.0
  %7798 = vmatpush1.msra.mxu0 0.0
  %7799 = vmatprep.subr.mxu0 0.0
  %7800 = vmatpush1.msra.mxu0 0.0
  %7801 = vmatprep.subr.mxu0 0.0
  %7802 = vmatpush1.msra.mxu0 0.0
  %7803 = vmatprep.subr.mxu0 0.0
  %7804 = vmatpush1.msra.mxu0 0.0
  %7805 = vmatprep.subr.mxu0 0.0
  %7806 = vmatpush1.msra.mxu0 0.0
  %7807 = vmatprep.subr.mxu0 0.0
  %7808 = vmatpush1.msra.mxu0 0.0
  %7809 = vmatprep.subr.mxu0 0.0
  %7810 = vmatpush1.msra.mxu0 0.0
  %7811 = vmatprep.subr.mxu0 0.0
  %7812 = vmatpush1.msra.mxu0 0.0
  %7813 = vmatprep.subr.mxu0 0.0
  %7814 = vmatpush1.msra.mxu0 0.0
  %7815 = vmatprep.subr.mxu0 0.0
  %7816 = vmatpush1.msra.mxu0 0.0
  %7817 = vmatprep.mubr.f32.mxu0 0.0
  %7818 = vmatmul.mubr.f32.gmra.mrb[0].mxu0 %v5149
  %v7819 = vpop.f32.mrb[0].mxu0
  %v7820 = vadd.f32 0.0, %v7819
  %v7821 = vpop.f32.mrb[0].mxu0
  %7822 = vmatprep.mubr.f32.mxu0 0.0
  %7823 = vmatmul.mubr.f32.gmra.mrb[0].mxu0 %v5152
  %v7824 = vpop.f32.mrb[0].mxu0
  %v7825 = vadd.f32 0.0, %v7824
  %v7826 = vpop.f32.mrb[0].mxu0
  %7827 = vmatprep.mubr.f32.mxu0 0.0
  %7828 = vmatmul.mubr.f32.gmra.mrb[0].mxu0 %v5155
  %v7829 = vpop.f32.mrb[0].mxu0
  %v7830 = vadd.f32 0.0, %v7829
  %v7831 = vpop.f32.mrb[0].mxu0
  %7832 = vmatprep.mubr.f32.mxu0 0.0
  %7833 = vmatmul.mubr.f32.gmra.mrb[0].mxu0 %v5158
  %v7834 = vpop.f32.mrb[0].mxu0
  %v7835 = vadd.f32 0.0, %v7834
  %v7836 = vpop.f32.mrb[0].mxu0
  %7837 = vmatprep.mubr.f32.mxu0 0.0
  %7838 = vmatmul.mubr.f32.gmra.mrb[0].mxu0 %v5161
  %v7839 = vpop.f32.mrb[0].mxu0
  %v7840 = vadd.f32 0.0, %v7839
  %v7841 = vpop.f32.mrb[0].mxu0
  %7842 = vmatprep.mubr.f32.mxu0 0.0
  %7843 = vmatmul.mubr.f32.gmra.mrb[0].mxu0 %v5164
  %v7844 = vpop.f32.mrb[0].mxu0
  %v7845 = vadd.f32 0.0, %v7844
  %v7846 = vpop.f32.mrb[0].mxu0
  %7847 = vmatprep.mubr.f32.mxu0 0.0
  %7848 = vmatmul.mubr.f32.gmra.mrb[0].mxu0 %v5167
  %v7849 = vpop.f32.mrb[0].mxu0
  %v7850 = vadd.f32 0.0, %v7849
  %v7851 = vpop.f32.mrb[0].mxu0
  %7852 = vmatprep.mubr.f32.mxu0 0.0
  %7853 = vmatmul.mubr.f32.gmra.mrb[0].mxu0 %v5170
  %v7854 = vpop.f32.mrb[0].mxu0
  %v7855 = vpop.f32.mrb[0].mxu0
  %7856 = vmatprep.mubr.f32.mxu0 0.0
  %7857 = vmatmul.mubr.f32.gmra.mrb[0].mxu0 %v5173
  %v7858 = vpop.f32.mrb[0].mxu0
  %v7859 = vadd.f32 0.0, %v7858
  %v7860 = vpop.f32.mrb[0].mxu0
  %7861 = vmatprep.mubr.f32.mxu0 0.0
  %7862 = vmatmul.mubr.f32.gmra.mrb[0].mxu0 %v5176
  %v7863 = vpop.f32.mrb[0].mxu0
  %v7864 = vadd.f32 0.0, %v7863
  %v7865 = vpop.f32.mrb[0].mxu0
  %7866 = vmatprep.mubr.f32.mxu0 0.0
  %7867 = vmatmul.mubr.f32.gmra.mrb[0].mxu0 %v5179
  %v7868 = vpop.f32.mrb[0].mxu0
  %v7869 = vadd.f32 0.0, %v7868
  %v7870 = vpop.f32.mrb[0].mxu0
  %7871 = vmatprep.mubr.f32.mxu0 0.0
  %7872 = vmatmul.mubr.f32.gmra.mrb[0].mxu0 %v5182
  %v7873 = vpop.f32.mrb[0].mxu0
  %v7874 = vadd.f32 0.0, %v7873
  %v7875 = vpop.f32.mrb[0].mxu0
  %7876 = vmatprep.mubr.f32.mxu0 0.0
  %7877 = vmatmul.mubr.f32.gmra.mrb[0].mxu0 %v5185
  %v7878 = vpop.f32.mrb[0].mxu0
  %v7879 = vadd.f32 0.0, %v7878
  %v7880 = vpop.f32.mrb[0].mxu0
  %7881 = vmatprep.mubr.f32.mxu0 0.0
  %7882 = vmatmul.mubr.f32.gmra.mrb[0].mxu0 %v5188
  %v7883 = vpop.f32.mrb[0].mxu0
  %v7884 = vadd.f32 0.0, %v7883
  %v7885 = vpop.f32.mrb[0].mxu0
  %7886 = vmatprep.mubr.f32.mxu0 0.0
  %7887 = vmatmul.mubr.f32.gmra.mrb[0].mxu0 %v5191
  %v7888 = vpop.f32.mrb[0].mxu0
  %v7889 = vadd.f32 0.0, %v7888
  %v7890 = vpop.f32.mrb[0].mxu0
  %7891 = vdwg.mxu0
  %v7892 = vadd.f32 %v7739, %v7820
  %v7893 = vadd.f32 %v7740, %v7825
  %v7894 = vadd.f32 %v7741, %v7830
  %v7895 = vadd.f32 %v7742, %v7835
  %v7896 = vadd.f32 %v7743, %v7840
  %v7897 = vadd.f32 %v7744, %v7845
  %v7898 = vadd.f32 %v7745, %v7850
  %v7899 = vadd.f32 %v7746, %v7859
  %v7900 = vadd.f32 %v7747, %v7864
  %v7901 = vadd.f32 %v7748, %v7869
  %v7902 = vadd.f32 %v7749, %v7874
  %v7903 = vadd.f32 %v7750, %v7879
  %v7904 = vadd.f32 %v7751, %v7884
  %v7905 = vadd.f32 %v7752, %v7889
  %7906 = vmatprep.subr.mxu0 0.0
  %7907 = vmatpush1.msra.mxu0 %v4708
  %7908 = vmatprep.subr.mxu0 0.0
  %7909 = vmatpush1.msra.mxu0 %v4709
  %7910 = vmatprep.subr.mxu0 0.0
  %7911 = vmatpush1.msra.mxu0 %v4710
  %7912 = vmatprep.subr.mxu0 0.0
  %7913 = vmatpush1.msra.mxu0 %v4711
  %7914 = vmatprep.subr.mxu0 0.0
  %7915 = vmatpush1.msra.mxu0 0.0
  %7916 = vmatprep.subr.mxu0 0.0
  %7917 = vmatpush1.msra.mxu0 0.0
  %7918 = vmatprep.subr.mxu0 0.0
  %7919 = vmatpush1.msra.mxu0 0.0
  %7920 = vmatprep.subr.mxu0 0.0
  %7921 = vmatpush1.msra.mxu0 0.0
  %7922 = vmatprep.subr.mxu0 0.0
  %7923 = vmatpush1.msra.mxu0 0.0
  %7924 = vmatprep.subr.mxu0 0.0
  %7925 = vmatpush1.msra.mxu0 0.0
  %7926 = vmatprep.subr.mxu0 0.0
  %7927 = vmatpush1.msra.mxu0 0.0
  %7928 = vmatprep.subr.mxu0 0.0
  %7929 = vmatpush1.msra.mxu0 0.0
  %7930 = vmatprep.subr.mxu0 0.0
  %7931 = vmatpush1.msra.mxu0 0.0
  %7932 = vmatprep.subr.mxu0 0.0
  %7933 = vmatpush1.msra.mxu0 0.0
  %7934 = vmatprep.subr.mxu0 0.0
  %7935 = vmatpush1.msra.mxu0 0.0
  %7936 = vmatprep.subr.mxu0 0.0
  %7937 = vmatpush1.msra.mxu0 0.0
  %7938 = vmatprep.subr.mxu0 0.0
  %7939 = vmatpush1.msra.mxu0 0.0
  %7940 = vmatprep.subr.mxu0 0.0
  %7941 = vmatpush1.msra.mxu0 0.0
  %7942 = vmatprep.subr.mxu0 0.0
  %7943 = vmatpush1.msra.mxu0 0.0
  %7944 = vmatprep.subr.mxu0 0.0
  %7945 = vmatpush1.msra.mxu0 0.0
  %7946 = vmatprep.subr.mxu0 0.0
  %7947 = vmatpush1.msra.mxu0 0.0
  %7948 = vmatprep.subr.mxu0 0.0
  %7949 = vmatpush1.msra.mxu0 0.0
  %7950 = vmatprep.subr.mxu0 0.0
  %7951 = vmatpush1.msra.mxu0 0.0
  %7952 = vmatprep.subr.mxu0 0.0
  %7953 = vmatpush1.msra.mxu0 0.0
  %7954 = vmatprep.subr.mxu0 0.0
  %7955 = vmatpush1.msra.mxu0 0.0
  %7956 = vmatprep.subr.mxu0 0.0
  %7957 = vmatpush1.msra.mxu0 0.0
  %7958 = vmatprep.subr.mxu0 0.0
  %7959 = vmatpush1.msra.mxu0 0.0
  %7960 = vmatprep.subr.mxu0 0.0
  %7961 = vmatpush1.msra.mxu0 0.0
  %7962 = vmatprep.subr.mxu0 0.0
  %7963 = vmatpush1.msra.mxu0 0.0
  %7964 = vmatprep.subr.mxu0 0.0
  %7965 = vmatpush1.msra.mxu0 0.0
  %7966 = vmatprep.subr.mxu0 0.0
  %7967 = vmatpush1.msra.mxu0 0.0
  %7968 = vmatprep.subr.mxu0 0.0
  %7969 = vmatpush1.msra.mxu0 0.0
  %7970 = vmatprep.mubr.f32.mxu0 0.0
  %7971 = vmatmul.mubr.f32.gmra.mrb[0].mxu0 %v5367
  %v7972 = vpop.f32.mrb[0].mxu0
  %v7973 = vadd.f32 0.0, %v7972
  %v7974 = vpop.f32.mrb[0].mxu0
  %7975 = vmatprep.mubr.f32.mxu0 0.0
  %7976 = vmatmul.mubr.f32.gmra.mrb[0].mxu0 %v5370
  %v7977 = vpop.f32.mrb[0].mxu0
  %v7978 = vadd.f32 0.0, %v7977
  %v7979 = vpop.f32.mrb[0].mxu0
  %7980 = vmatprep.mubr.f32.mxu0 0.0
  %7981 = vmatmul.mubr.f32.gmra.mrb[0].mxu0 %v5373
  %v7982 = vpop.f32.mrb[0].mxu0
  %v7983 = vadd.f32 0.0, %v7982
  %v7984 = vpop.f32.mrb[0].mxu0
  %7985 = vmatprep.mubr.f32.mxu0 0.0
  %7986 = vmatmul.mubr.f32.gmra.mrb[0].mxu0 %v5376
  %v7987 = vpop.f32.mrb[0].mxu0
  %v7988 = vadd.f32 0.0, %v7987
  %v7989 = vpop.f32.mrb[0].mxu0
  %7990 = vmatprep.mubr.f32.mxu0 0.0
  %7991 = vmatmul.mubr.f32.gmra.mrb[0].mxu0 %v5379
  %v7992 = vpop.f32.mrb[0].mxu0
  %v7993 = vadd.f32 0.0, %v7992
  %v7994 = vpop.f32.mrb[0].mxu0
  %7995 = vmatprep.mubr.f32.mxu0 0.0
  %7996 = vmatmul.mubr.f32.gmra.mrb[0].mxu0 %v5382
  %v7997 = vpop.f32.mrb[0].mxu0
  %v7998 = vadd.f32 0.0, %v7997
  %v7999 = vpop.f32.mrb[0].mxu0
  %8000 = vmatprep.mubr.f32.mxu0 0.0
  %8001 = vmatmul.mubr.f32.gmra.mrb[0].mxu0 %v5385
  %v8002 = vpop.f32.mrb[0].mxu0
  %v8003 = vadd.f32 0.0, %v8002
  %v8004 = vpop.f32.mrb[0].mxu0
  %8005 = vmatprep.mubr.f32.mxu0 0.0
  %8006 = vmatmul.mubr.f32.gmra.mrb[0].mxu0 %v5388
  %v8007 = vpop.f32.mrb[0].mxu0
  %v8008 = vpop.f32.mrb[0].mxu0
  %8009 = vmatprep.mubr.f32.mxu0 0.0
  %8010 = vmatmul.mubr.f32.gmra.mrb[0].mxu0 %v5391
  %v8011 = vpop.f32.mrb[0].mxu0
  %v8012 = vadd.f32 0.0, %v8011
  %v8013 = vpop.f32.mrb[0].mxu0
  %8014 = vmatprep.mubr.f32.mxu0 0.0
  %8015 = vmatmul.mubr.f32.gmra.mrb[0].mxu0 %v5394
  %v8016 = vpop.f32.mrb[0].mxu0
  %v8017 = vadd.f32 0.0, %v8016
  %v8018 = vpop.f32.mrb[0].mxu0
  %8019 = vmatprep.mubr.f32.mxu0 0.0
  %8020 = vmatmul.mubr.f32.gmra.mrb[0].mxu0 %v5397
  %v8021 = vpop.f32.mrb[0].mxu0
  %v8022 = vadd.f32 0.0, %v8021
  %v8023 = vpop.f32.mrb[0].mxu0
  %8024 = vmatprep.mubr.f32.mxu0 0.0
  %8025 = vmatmul.mubr.f32.gmra.mrb[0].mxu0 %v5400
  %v8026 = vpop.f32.mrb[0].mxu0
  %v8027 = vadd.f32 0.0, %v8026
  %v8028 = vpop.f32.mrb[0].mxu0
  %8029 = vmatprep.mubr.f32.mxu0 0.0
  %8030 = vmatmul.mubr.f32.gmra.mrb[0].mxu0 %v5403
  %v8031 = vpop.f32.mrb[0].mxu0
  %v8032 = vadd.f32 0.0, %v8031
  %v8033 = vpop.f32.mrb[0].mxu0
  %8034 = vmatprep.mubr.f32.mxu0 0.0
  %8035 = vmatmul.mubr.f32.gmra.mrb[0].mxu0 %v5406
  %v8036 = vpop.f32.mrb[0].mxu0
  %v8037 = vadd.f32 0.0, %v8036
  %v8038 = vpop.f32.mrb[0].mxu0
  %8039 = vmatprep.mubr.f32.mxu0 0.0
  %8040 = vmatmul.mubr.f32.gmra.mrb[0].mxu0 %v5409
  %v8041 = vpop.f32.mrb[0].mxu0
  %v8042 = vadd.f32 0.0, %v8041
  %v8043 = vpop.f32.mrb[0].mxu0
  %8044 = vdwg.mxu0
  %v8045 = vadd.f32 %v7892, %v7973
  %v8046 = vadd.f32 %v7893, %v7978
  %v8047 = vadd.f32 %v7894, %v7983
  %v8048 = vadd.f32 %v7895, %v7988
  %v8049 = vadd.f32 %v7896, %v7993
  %v8050 = vadd.f32 %v7897, %v7998
  %v8051 = vadd.f32 %v7898, %v8003
  %v8052 = vadd.f32 %v7899, %v8012
  %v8053 = vadd.f32 %v7900, %v8017
  %v8054 = vadd.f32 %v7901, %v8022
  %v8055 = vadd.f32 %v7902, %v8027
  %v8056 = vadd.f32 %v7903, %v8032
  %v8057 = vadd.f32 %v7904, %v8037
  %v8058 = vadd.f32 %v7905, %v8042
  %v8059 = vld [vmem:[#allocation2 + $0x108] sm:$0xff]
  %v8060 = vld [vmem:[#allocation2 + $0x110] sm:$0xff]
  %v8061 = vld [vmem:[#allocation2 + $0x118] sm:$0xff]
  %v8062 = vld [vmem:[#allocation2 + $0x120] sm:$0xff]
  %v8063 = vld [vmem:[#allocation2 + $0x128] sm:$0xff]
  %v8064 = vld [vmem:[#allocation2 + $0x130] sm:$0xff]
  %v8065 = vld [vmem:[#allocation2 + $0x138] sm:$0xff]
  %v8066 = vld [vmem:[#allocation2 + $0x140] sm:$0xff]
  %v8067 = vld [vmem:[#allocation2 + $0x148] sm:$0xff]
  %v8068 = vld [vmem:[#allocation2 + $0x150] sm:$0xff]
  %v8069 = vld [vmem:[#allocation2 + $0x158] sm:$0xff]
  %v8070 = vld [vmem:[#allocation2 + $0x160] sm:$0xff]
  %v8071 = vld [vmem:[#allocation2 + $0x168] sm:$0xff]
  %v8072 = vld [vmem:[#allocation2 + $0x170] sm:$0xff]
  %v8073 = vld [vmem:[#allocation2 + $0x178] sm:$0xff]
  %v8075 = vsel %vm3500, %v8059, 0
  %v8078 = vsel %vm3500, %v8060, 0
  %v8081 = vsel %vm3500, %v8061, 0
  %v8084 = vsel %vm3500, %v8062, 0
  %v8087 = vsel %vm3500, %v8063, 0
  %v8090 = vsel %vm3500, %v8064, 0
  %v8093 = vsel %vm3500, %v8065, 0
  %v8096 = vsel %vm3500, %v8066, 0
  %v8099 = vsel %vm3500, %v8067, 0
  %v8102 = vsel %vm3500, %v8068, 0
  %v8105 = vsel %vm3500, %v8069, 0
  %v8108 = vsel %vm3500, %v8070, 0
  %v8111 = vsel %vm3500, %v8071, 0
  %v8114 = vsel %vm3500, %v8072, 0
  %v8117 = vsel %vm3500, %v8073, 0
  %8119 = vmatprep.subr.mxu0 0.0
  %8120 = vmatpush1.msra.mxu0 %v4926
  %8121 = vmatprep.subr.mxu0 0.0
  %8122 = vmatpush1.msra.mxu0 %v4927
  %8123 = vmatprep.subr.mxu0 0.0
  %8124 = vmatpush1.msra.mxu0 %v4928
  %8125 = vmatprep.subr.mxu0 0.0
  %8126 = vmatpush1.msra.mxu0 %v4929
  %8127 = vmatprep.subr.mxu0 0.0
  %8128 = vmatpush1.msra.mxu0 0.0
  %8129 = vmatprep.subr.mxu0 0.0
  %8130 = vmatpush1.msra.mxu0 0.0
  %8131 = vmatprep.subr.mxu0 0.0
  %8132 = vmatpush1.msra.mxu0 0.0
  %8133 = vmatprep.subr.mxu0 0.0
  %8134 = vmatpush1.msra.mxu0 0.0
  %8135 = vmatprep.subr.mxu0 0.0
  %8136 = vmatpush1.msra.mxu0 0.0
  %8137 = vmatprep.subr.mxu0 0.0
  %8138 = vmatpush1.msra.mxu0 0.0
  %8139 = vmatprep.subr.mxu0 0.0
  %8140 = vmatpush1.msra.mxu0 0.0
  %8141 = vmatprep.subr.mxu0 0.0
  %8142 = vmatpush1.msra.mxu0 0.0
  %8143 = vmatprep.subr.mxu0 0.0
  %8144 = vmatpush1.msra.mxu0 0.0
  %8145 = vmatprep.subr.mxu0 0.0
  %8146 = vmatpush1.msra.mxu0 0.0
  %8147 = vmatprep.subr.mxu0 0.0
  %8148 = vmatpush1.msra.mxu0 0.0
  %8149 = vmatprep.subr.mxu0 0.0
  %8150 = vmatpush1.msra.mxu0 0.0
  %8151 = vmatprep.subr.mxu0 0.0
  %8152 = vmatpush1.msra.mxu0 0.0
  %8153 = vmatprep.subr.mxu0 0.0
  %8154 = vmatpush1.msra.mxu0 0.0
  %8155 = vmatprep.subr.mxu0 0.0
  %8156 = vmatpush1.msra.mxu0 0.0
  %8157 = vmatprep.subr.mxu0 0.0
  %8158 = vmatpush1.msra.mxu0 0.0
  %8159 = vmatprep.subr.mxu0 0.0
  %8160 = vmatpush1.msra.mxu0 0.0
  %8161 = vmatprep.subr.mxu0 0.0
  %8162 = vmatpush1.msra.mxu0 0.0
  %8163 = vmatprep.subr.mxu0 0.0
  %8164 = vmatpush1.msra.mxu0 0.0
  %8165 = vmatprep.subr.mxu0 0.0
  %8166 = vmatpush1.msra.mxu0 0.0
  %8167 = vmatprep.subr.mxu0 0.0
  %8168 = vmatpush1.msra.mxu0 0.0
  %8169 = vmatprep.subr.mxu0 0.0
  %8170 = vmatpush1.msra.mxu0 0.0
  %8171 = vmatprep.subr.mxu0 0.0
  %8172 = vmatpush1.msra.mxu0 0.0
  %8173 = vmatprep.subr.mxu0 0.0
  %8174 = vmatpush1.msra.mxu0 0.0
  %8175 = vmatprep.subr.mxu0 0.0
  %8176 = vmatpush1.msra.mxu0 0.0
  %8177 = vmatprep.subr.mxu0 0.0
  %8178 = vmatpush1.msra.mxu0 0.0
  %8179 = vmatprep.subr.mxu0 0.0
  %8180 = vmatpush1.msra.mxu0 0.0
  %8181 = vmatprep.subr.mxu0 0.0
  %8182 = vmatpush1.msra.mxu0 0.0
  %8183 = vmatprep.mubr.f32.mxu0 0.0
  %8184 = vmatmul.mubr.f32.gmra.mrb[0].mxu0 %v8075
  %v8185 = vpop.f32.mrb[0].mxu0
  %v8186 = vadd.f32 0.0, %v8185
  %v8187 = vpop.f32.mrb[0].mxu0
  %8188 = vmatprep.mubr.f32.mxu0 0.0
  %8189 = vmatmul.mubr.f32.gmra.mrb[0].mxu0 %v8078
  %v8190 = vpop.f32.mrb[0].mxu0
  %v8191 = vadd.f32 0.0, %v8190
  %v8192 = vpop.f32.mrb[0].mxu0
  %8193 = vmatprep.mubr.f32.mxu0 0.0
  %8194 = vmatmul.mubr.f32.gmra.mrb[0].mxu0 %v8081
  %v8195 = vpop.f32.mrb[0].mxu0
  %v8196 = vadd.f32 0.0, %v8195
  %v8197 = vpop.f32.mrb[0].mxu0
  %8198 = vmatprep.mubr.f32.mxu0 0.0
  %8199 = vmatmul.mubr.f32.gmra.mrb[0].mxu0 %v8084
  %v8200 = vpop.f32.mrb[0].mxu0
  %v8201 = vadd.f32 0.0, %v8200
  %v8202 = vpop.f32.mrb[0].mxu0
  %8203 = vmatprep.mubr.f32.mxu0 0.0
  %8204 = vmatmul.mubr.f32.gmra.mrb[0].mxu0 %v8087
  %v8205 = vpop.f32.mrb[0].mxu0
  %v8206 = vadd.f32 0.0, %v8205
  %v8207 = vpop.f32.mrb[0].mxu0
  %8208 = vmatprep.mubr.f32.mxu0 0.0
  %8209 = vmatmul.mubr.f32.gmra.mrb[0].mxu0 %v8090
  %v8210 = vpop.f32.mrb[0].mxu0
  %v8211 = vadd.f32 0.0, %v8210
  %v8212 = vpop.f32.mrb[0].mxu0
  %8213 = vmatprep.mubr.f32.mxu0 0.0
  %8214 = vmatmul.mubr.f32.gmra.mrb[0].mxu0 %v8093
  %v8215 = vpop.f32.mrb[0].mxu0
  %v8216 = vadd.f32 0.0, %v8215
  %v8217 = vpop.f32.mrb[0].mxu0
  %8218 = vmatprep.mubr.f32.mxu0 0.0
  %8219 = vmatmul.mubr.f32.gmra.mrb[0].mxu0 %v8096
  %v8220 = vpop.f32.mrb[0].mxu0
  %v8221 = vpop.f32.mrb[0].mxu0
  %8222 = vmatprep.mubr.f32.mxu0 0.0
  %8223 = vmatmul.mubr.f32.gmra.mrb[0].mxu0 %v8099
  %v8224 = vpop.f32.mrb[0].mxu0
  %v8225 = vadd.f32 0.0, %v8224
  %v8226 = vpop.f32.mrb[0].mxu0
  %8227 = vmatprep.mubr.f32.mxu0 0.0
  %8228 = vmatmul.mubr.f32.gmra.mrb[0].mxu0 %v8102
  %v8229 = vpop.f32.mrb[0].mxu0
  %v8230 = vadd.f32 0.0, %v8229
  %v8231 = vpop.f32.mrb[0].mxu0
  %8232 = vmatprep.mubr.f32.mxu0 0.0
  %8233 = vmatmul.mubr.f32.gmra.mrb[0].mxu0 %v8105
  %v8234 = vpop.f32.mrb[0].mxu0
  %v8235 = vadd.f32 0.0, %v8234
  %v8236 = vpop.f32.mrb[0].mxu0
  %8237 = vmatprep.mubr.f32.mxu0 0.0
  %8238 = vmatmul.mubr.f32.gmra.mrb[0].mxu0 %v8108
  %v8239 = vpop.f32.mrb[0].mxu0
  %v8240 = vadd.f32 0.0, %v8239
  %v8241 = vpop.f32.mrb[0].mxu0
  %8242 = vmatprep.mubr.f32.mxu0 0.0
  %8243 = vmatmul.mubr.f32.gmra.mrb[0].mxu0 %v8111
  %v8244 = vpop.f32.mrb[0].mxu0
  %v8245 = vadd.f32 0.0, %v8244
  %v8246 = vpop.f32.mrb[0].mxu0
  %8247 = vmatprep.mubr.f32.mxu0 0.0
  %8248 = vmatmul.mubr.f32.gmra.mrb[0].mxu0 %v8114
  %v8249 = vpop.f32.mrb[0].mxu0
  %v8250 = vadd.f32 0.0, %v8249
  %v8251 = vpop.f32.mrb[0].mxu0
  %8252 = vmatprep.mubr.f32.mxu0 0.0
  %8253 = vmatmul.mubr.f32.gmra.mrb[0].mxu0 %v8117
  %v8254 = vpop.f32.mrb[0].mxu0
  %v8255 = vadd.f32 0.0, %v8254
  %v8256 = vpop.f32.mrb[0].mxu0
  %8257 = vdwg.mxu0
  %v8258 = vadd.f32 %v8045, %v8186
  %v8259 = vadd.f32 %v8046, %v8191
  %v8260 = vadd.f32 %v8047, %v8196
  %v8261 = vadd.f32 %v8048, %v8201
  %v8262 = vadd.f32 %v8049, %v8206
  %v8263 = vadd.f32 %v8050, %v8211
  %v8264 = vadd.f32 %v8051, %v8216
  %v8265 = vadd.f32 %v8052, %v8225
  %v8266 = vadd.f32 %v8053, %v8230
  %v8267 = vadd.f32 %v8054, %v8235
  %v8268 = vadd.f32 %v8055, %v8240
  %v8269 = vadd.f32 %v8056, %v8245
  %v8270 = vadd.f32 %v8057, %v8250
  %v8271 = vadd.f32 %v8058, %v8255
  %v8272 = vld [vmem:[#allocation2 + $0x188] sm:$0xff]
  %v8273 = vld [vmem:[#allocation2 + $0x190] sm:$0xff]
  %v8274 = vld [vmem:[#allocation2 + $0x198] sm:$0xff]
  %v8275 = vld [vmem:[#allocation2 + $0x1a0] sm:$0xff]
  %v8276 = vld [vmem:[#allocation2 + $0x1a8] sm:$0xff]
  %v8277 = vld [vmem:[#allocation2 + $0x1b0] sm:$0xff]
  %v8278 = vld [vmem:[#allocation2 + $0x1b8] sm:$0xff]
  %v8279 = vld [vmem:[#allocation2 + $0x1c0] sm:$0xff]
  %v8280 = vld [vmem:[#allocation2 + $0x1c8] sm:$0xff]
  %v8281 = vld [vmem:[#allocation2 + $0x1d0] sm:$0xff]
  %v8282 = vld [vmem:[#allocation2 + $0x1d8] sm:$0xff]
  %v8283 = vld [vmem:[#allocation2 + $0x1e0] sm:$0xff]
  %v8284 = vld [vmem:[#allocation2 + $0x1e8] sm:$0xff]
  %v8285 = vld [vmem:[#allocation2 + $0x1f0] sm:$0xff]
  %v8286 = vld [vmem:[#allocation2 + $0x1f8] sm:$0xff]
  %v8288 = vsel %vm3500, %v8272, 0
  %v8291 = vsel %vm3500, %v8273, 0
  %v8294 = vsel %vm3500, %v8274, 0
  %v8297 = vsel %vm3500, %v8275, 0
  %v8300 = vsel %vm3500, %v8276, 0
  %v8303 = vsel %vm3500, %v8277, 0
  %v8306 = vsel %vm3500, %v8278, 0
  %v8309 = vsel %vm3500, %v8279, 0
  %v8312 = vsel %vm3500, %v8280, 0
  %v8315 = vsel %vm3500, %v8281, 0
  %v8318 = vsel %vm3500, %v8282, 0
  %v8321 = vsel %vm3500, %v8283, 0
  %v8324 = vsel %vm3500, %v8284, 0
  %v8327 = vsel %vm3500, %v8285, 0
  %v8330 = vsel %vm3500, %v8286, 0
  %8332 = vmatprep.subr.mxu0 0.0
  %8333 = vmatpush1.msra.mxu0 %v5144
  %8334 = vmatprep.subr.mxu0 0.0
  %8335 = vmatpush1.msra.mxu0 %v5145
  %8336 = vmatprep.subr.mxu0 0.0
  %8337 = vmatpush1.msra.mxu0 %v5146
  %8338 = vmatprep.subr.mxu0 0.0
  %8339 = vmatpush1.msra.mxu0 %v5147
  %8340 = vmatprep.subr.mxu0 0.0
  %8341 = vmatpush1.msra.mxu0 0.0
  %8342 = vmatprep.subr.mxu0 0.0
  %8343 = vmatpush1.msra.mxu0 0.0
  %8344 = vmatprep.subr.mxu0 0.0
  %8345 = vmatpush1.msra.mxu0 0.0
  %8346 = vmatprep.subr.mxu0 0.0
  %8347 = vmatpush1.msra.mxu0 0.0
  %8348 = vmatprep.subr.mxu0 0.0
  %8349 = vmatpush1.msra.mxu0 0.0
  %8350 = vmatprep.subr.mxu0 0.0
  %8351 = vmatpush1.msra.mxu0 0.0
  %8352 = vmatprep.subr.mxu0 0.0
  %8353 = vmatpush1.msra.mxu0 0.0
  %8354 = vmatprep.subr.mxu0 0.0
  %8355 = vmatpush1.msra.mxu0 0.0
  %8356 = vmatprep.subr.mxu0 0.0
  %8357 = vmatpush1.msra.mxu0 0.0
  %8358 = vmatprep.subr.mxu0 0.0
  %8359 = vmatpush1.msra.mxu0 0.0
  %8360 = vmatprep.subr.mxu0 0.0
  %8361 = vmatpush1.msra.mxu0 0.0
  %8362 = vmatprep.subr.mxu0 0.0
  %8363 = vmatpush1.msra.mxu0 0.0
  %8364 = vmatprep.subr.mxu0 0.0
  %8365 = vmatpush1.msra.mxu0 0.0
  %8366 = vmatprep.subr.mxu0 0.0
  %8367 = vmatpush1.msra.mxu0 0.0
  %8368 = vmatprep.subr.mxu0 0.0
  %8369 = vmatpush1.msra.mxu0 0.0
  %8370 = vmatprep.subr.mxu0 0.0
  %8371 = vmatpush1.msra.mxu0 0.0
  %8372 = vmatprep.subr.mxu0 0.0
  %8373 = vmatpush1.msra.mxu0 0.0
  %8374 = vmatprep.subr.mxu0 0.0
  %8375 = vmatpush1.msra.mxu0 0.0
  %8376 = vmatprep.subr.mxu0 0.0
  %8377 = vmatpush1.msra.mxu0 0.0
  %8378 = vmatprep.subr.mxu0 0.0
  %8379 = vmatpush1.msra.mxu0 0.0
  %8380 = vmatprep.subr.mxu0 0.0
  %8381 = vmatpush1.msra.mxu0 0.0
  %8382 = vmatprep.subr.mxu0 0.0
  %8383 = vmatpush1.msra.mxu0 0.0
  %8384 = vmatprep.subr.mxu0 0.0
  %8385 = vmatpush1.msra.mxu0 0.0
  %8386 = vmatprep.subr.mxu0 0.0
  %8387 = vmatpush1.msra.mxu0 0.0
  %8388 = vmatprep.subr.mxu0 0.0
  %8389 = vmatpush1.msra.mxu0 0.0
  %8390 = vmatprep.subr.mxu0 0.0
  %8391 = vmatpush1.msra.mxu0 0.0
  %8392 = vmatprep.subr.mxu0 0.0
  %8393 = vmatpush1.msra.mxu0 0.0
  %8394 = vmatprep.subr.mxu0 0.0
  %8395 = vmatpush1.msra.mxu0 0.0
  %8396 = vmatprep.mubr.f32.mxu0 0.0
  %8397 = vmatmul.mubr.f32.gmra.mrb[0].mxu0 %v8288
  %v8398 = vpop.f32.mrb[0].mxu0
  %v8399 = vadd.f32 0.0, %v8398
  %v8400 = vpop.f32.mrb[0].mxu0
  %8401 = vmatprep.mubr.f32.mxu0 0.0
  %8402 = vmatmul.mubr.f32.gmra.mrb[0].mxu0 %v8291
  %v8403 = vpop.f32.mrb[0].mxu0
  %v8404 = vadd.f32 0.0, %v8403
  %v8405 = vpop.f32.mrb[0].mxu0
  %8406 = vmatprep.mubr.f32.mxu0 0.0
  %8407 = vmatmul.mubr.f32.gmra.mrb[0].mxu0 %v8294
  %v8408 = vpop.f32.mrb[0].mxu0
  %v8409 = vadd.f32 0.0, %v8408
  %v8410 = vpop.f32.mrb[0].mxu0
  %8411 = vmatprep.mubr.f32.mxu0 0.0
  %8412 = vmatmul.mubr.f32.gmra.mrb[0].mxu0 %v8297
  %v8413 = vpop.f32.mrb[0].mxu0
  %v8414 = vadd.f32 0.0, %v8413
  %v8415 = vpop.f32.mrb[0].mxu0
  %8416 = vmatprep.mubr.f32.mxu0 0.0
  %8417 = vmatmul.mubr.f32.gmra.mrb[0].mxu0 %v8300
  %v8418 = vpop.f32.mrb[0].mxu0
  %v8419 = vadd.f32 0.0, %v8418
  %v8420 = vpop.f32.mrb[0].mxu0
  %8421 = vmatprep.mubr.f32.mxu0 0.0
  %8422 = vmatmul.mubr.f32.gmra.mrb[0].mxu0 %v8303
  %v8423 = vpop.f32.mrb[0].mxu0
  %v8424 = vadd.f32 0.0, %v8423
  %v8425 = vpop.f32.mrb[0].mxu0
  %8426 = vmatprep.mubr.f32.mxu0 0.0
  %8427 = vmatmul.mubr.f32.gmra.mrb[0].mxu0 %v8306
  %v8428 = vpop.f32.mrb[0].mxu0
  %v8429 = vadd.f32 0.0, %v8428
  %v8430 = vpop.f32.mrb[0].mxu0
  %8431 = vmatprep.mubr.f32.mxu0 0.0
  %8432 = vmatmul.mubr.f32.gmra.mrb[0].mxu0 %v8309
  %v8433 = vpop.f32.mrb[0].mxu0
  %v8434 = vpop.f32.mrb[0].mxu0
  %8435 = vmatprep.mubr.f32.mxu0 0.0
  %8436 = vmatmul.mubr.f32.gmra.mrb[0].mxu0 %v8312
  %v8437 = vpop.f32.mrb[0].mxu0
  %v8438 = vadd.f32 0.0, %v8437
  %v8439 = vpop.f32.mrb[0].mxu0
  %8440 = vmatprep.mubr.f32.mxu0 0.0
  %8441 = vmatmul.mubr.f32.gmra.mrb[0].mxu0 %v8315
  %v8442 = vpop.f32.mrb[0].mxu0
  %v8443 = vadd.f32 0.0, %v8442
  %v8444 = vpop.f32.mrb[0].mxu0
  %8445 = vmatprep.mubr.f32.mxu0 0.0
  %8446 = vmatmul.mubr.f32.gmra.mrb[0].mxu0 %v8318
  %v8447 = vpop.f32.mrb[0].mxu0
  %v8448 = vadd.f32 0.0, %v8447
  %v8449 = vpop.f32.mrb[0].mxu0
  %8450 = vmatprep.mubr.f32.mxu0 0.0
  %8451 = vmatmul.mubr.f32.gmra.mrb[0].mxu0 %v8321
  %v8452 = vpop.f32.mrb[0].mxu0
  %v8453 = vadd.f32 0.0, %v8452
  %v8454 = vpop.f32.mrb[0].mxu0
  %8455 = vmatprep.mubr.f32.mxu0 0.0
  %8456 = vmatmul.mubr.f32.gmra.mrb[0].mxu0 %v8324
  %v8457 = vpop.f32.mrb[0].mxu0
  %v8458 = vadd.f32 0.0, %v8457
  %v8459 = vpop.f32.mrb[0].mxu0
  %8460 = vmatprep.mubr.f32.mxu0 0.0
  %8461 = vmatmul.mubr.f32.gmra.mrb[0].mxu0 %v8327
  %v8462 = vpop.f32.mrb[0].mxu0
  %v8463 = vadd.f32 0.0, %v8462
  %v8464 = vpop.f32.mrb[0].mxu0
  %8465 = vmatprep.mubr.f32.mxu0 0.0
  %8466 = vmatmul.mubr.f32.gmra.mrb[0].mxu0 %v8330
  %v8467 = vpop.f32.mrb[0].mxu0
  %v8468 = vadd.f32 0.0, %v8467
  %v8469 = vpop.f32.mrb[0].mxu0
  %8470 = vdwg.mxu0
  %v8471 = vadd.f32 %v8258, %v8399
  %v8472 = vadd.f32 %v8259, %v8404
  %v8473 = vadd.f32 %v8260, %v8409
  %v8474 = vadd.f32 %v8261, %v8414
  %v8475 = vadd.f32 %v8262, %v8419
  %v8476 = vadd.f32 %v8263, %v8424
  %v8477 = vadd.f32 %v8264, %v8429
  %v8478 = vadd.f32 %v8265, %v8438
  %v8479 = vadd.f32 %v8266, %v8443
  %v8480 = vadd.f32 %v8267, %v8448
  %v8481 = vadd.f32 %v8268, %v8453
  %v8482 = vadd.f32 %v8269, %v8458
  %v8483 = vadd.f32 %v8270, %v8463
  %v8484 = vadd.f32 %v8271, %v8468
  %v8485 = vld [vmem:[#allocation2 + $0x109] sm:$0xff]
  %v8486 = vld [vmem:[#allocation2 + $0x111] sm:$0xff]
  %v8487 = vld [vmem:[#allocation2 + $0x119] sm:$0xff]
  %v8488 = vld [vmem:[#allocation2 + $0x121] sm:$0xff]
  %v8489 = vld [vmem:[#allocation2 + $0x129] sm:$0xff]
  %v8490 = vld [vmem:[#allocation2 + $0x131] sm:$0xff]
  %v8491 = vld [vmem:[#allocation2 + $0x139] sm:$0xff]
  %v8492 = vld [vmem:[#allocation2 + $0x141] sm:$0xff]
  %v8493 = vld [vmem:[#allocation2 + $0x149] sm:$0xff]
  %v8494 = vld [vmem:[#allocation2 + $0x151] sm:$0xff]
  %v8495 = vld [vmem:[#allocation2 + $0x159] sm:$0xff]
  %v8496 = vld [vmem:[#allocation2 + $0x161] sm:$0xff]
  %v8497 = vld [vmem:[#allocation2 + $0x169] sm:$0xff]
  %v8498 = vld [vmem:[#allocation2 + $0x171] sm:$0xff]
  %v8499 = vld [vmem:[#allocation2 + $0x179] sm:$0xff]
  %v8501 = vsel %vm3500, %v8485, 0
  %v8504 = vsel %vm3500, %v8486, 0
  %v8507 = vsel %vm3500, %v8487, 0
  %v8510 = vsel %vm3500, %v8488, 0
  %v8513 = vsel %vm3500, %v8489, 0
  %v8516 = vsel %vm3500, %v8490, 0
  %v8519 = vsel %vm3500, %v8491, 0
  %v8522 = vsel %vm3500, %v8492, 0
  %v8525 = vsel %vm3500, %v8493, 0
  %v8528 = vsel %vm3500, %v8494, 0
  %v8531 = vsel %vm3500, %v8495, 0
  %v8534 = vsel %vm3500, %v8496, 0
  %v8537 = vsel %vm3500, %v8497, 0
  %v8540 = vsel %vm3500, %v8498, 0
  %v8543 = vsel %vm3500, %v8499, 0
  %8545 = vmatprep.subr.mxu0 0.0
  %8546 = vmatpush1.msra.mxu0 %v5362
  %8547 = vmatprep.subr.mxu0 0.0
  %8548 = vmatpush1.msra.mxu0 %v5363
  %8549 = vmatprep.subr.mxu0 0.0
  %8550 = vmatpush1.msra.mxu0 %v5364
  %8551 = vmatprep.subr.mxu0 0.0
  %8552 = vmatpush1.msra.mxu0 %v5365
  %8553 = vmatprep.subr.mxu0 0.0
  %8554 = vmatpush1.msra.mxu0 0.0
  %8555 = vmatprep.subr.mxu0 0.0
  %8556 = vmatpush1.msra.mxu0 0.0
  %8557 = vmatprep.subr.mxu0 0.0
  %8558 = vmatpush1.msra.mxu0 0.0
  %8559 = vmatprep.subr.mxu0 0.0
  %8560 = vmatpush1.msra.mxu0 0.0
  %8561 = vmatprep.subr.mxu0 0.0
  %8562 = vmatpush1.msra.mxu0 0.0
  %8563 = vmatprep.subr.mxu0 0.0
  %8564 = vmatpush1.msra.mxu0 0.0
  %8565 = vmatprep.subr.mxu0 0.0
  %8566 = vmatpush1.msra.mxu0 0.0
  %8567 = vmatprep.subr.mxu0 0.0
  %8568 = vmatpush1.msra.mxu0 0.0
  %8569 = vmatprep.subr.mxu0 0.0
  %8570 = vmatpush1.msra.mxu0 0.0
  %8571 = vmatprep.subr.mxu0 0.0
  %8572 = vmatpush1.msra.mxu0 0.0
  %8573 = vmatprep.subr.mxu0 0.0
  %8574 = vmatpush1.msra.mxu0 0.0
  %8575 = vmatprep.subr.mxu0 0.0
  %8576 = vmatpush1.msra.mxu0 0.0
  %8577 = vmatprep.subr.mxu0 0.0
  %8578 = vmatpush1.msra.mxu0 0.0
  %8579 = vmatprep.subr.mxu0 0.0
  %8580 = vmatpush1.msra.mxu0 0.0
  %8581 = vmatprep.subr.mxu0 0.0
  %8582 = vmatpush1.msra.mxu0 0.0
  %8583 = vmatprep.subr.mxu0 0.0
  %8584 = vmatpush1.msra.mxu0 0.0
  %8585 = vmatprep.subr.mxu0 0.0
  %8586 = vmatpush1.msra.mxu0 0.0
  %8587 = vmatprep.subr.mxu0 0.0
  %8588 = vmatpush1.msra.mxu0 0.0
  %8589 = vmatprep.subr.mxu0 0.0
  %8590 = vmatpush1.msra.mxu0 0.0
  %8591 = vmatprep.subr.mxu0 0.0
  %8592 = vmatpush1.msra.mxu0 0.0
  %8593 = vmatprep.subr.mxu0 0.0
  %8594 = vmatpush1.msra.mxu0 0.0
  %8595 = vmatprep.subr.mxu0 0.0
  %8596 = vmatpush1.msra.mxu0 0.0
  %8597 = vmatprep.subr.mxu0 0.0
  %8598 = vmatpush1.msra.mxu0 0.0
  %8599 = vmatprep.subr.mxu0 0.0
  %8600 = vmatpush1.msra.mxu0 0.0
  %8601 = vmatprep.subr.mxu0 0.0
  %8602 = vmatpush1.msra.mxu0 0.0
  %8603 = vmatprep.subr.mxu0 0.0
  %8604 = vmatpush1.msra.mxu0 0.0
  %8605 = vmatprep.subr.mxu0 0.0
  %8606 = vmatpush1.msra.mxu0 0.0
  %8607 = vmatprep.subr.mxu0 0.0
  %8608 = vmatpush1.msra.mxu0 0.0
  %8609 = vmatprep.mubr.f32.mxu0 0.0
  %8610 = vmatmul.mubr.f32.gmra.mrb[0].mxu0 %v8501
  %v8611 = vpop.f32.mrb[0].mxu0
  %v8612 = vadd.f32 0.0, %v8611
  %v8613 = vpop.f32.mrb[0].mxu0
  %8614 = vmatprep.mubr.f32.mxu0 0.0
  %8615 = vmatmul.mubr.f32.gmra.mrb[0].mxu0 %v8504
  %v8616 = vpop.f32.mrb[0].mxu0
  %v8617 = vadd.f32 0.0, %v8616
  %v8618 = vpop.f32.mrb[0].mxu0
  %8619 = vmatprep.mubr.f32.mxu0 0.0
  %8620 = vmatmul.mubr.f32.gmra.mrb[0].mxu0 %v8507
  %v8621 = vpop.f32.mrb[0].mxu0
  %v8622 = vadd.f32 0.0, %v8621
  %v8623 = vpop.f32.mrb[0].mxu0
  %8624 = vmatprep.mubr.f32.mxu0 0.0
  %8625 = vmatmul.mubr.f32.gmra.mrb[0].mxu0 %v8510
  %v8626 = vpop.f32.mrb[0].mxu0
  %v8627 = vadd.f32 0.0, %v8626
  %v8628 = vpop.f32.mrb[0].mxu0
  %8629 = vmatprep.mubr.f32.mxu0 0.0
  %8630 = vmatmul.mubr.f32.gmra.mrb[0].mxu0 %v8513
  %v8631 = vpop.f32.mrb[0].mxu0
  %v8632 = vadd.f32 0.0, %v8631
  %v8633 = vpop.f32.mrb[0].mxu0
  %8634 = vmatprep.mubr.f32.mxu0 0.0
  %8635 = vmatmul.mubr.f32.gmra.mrb[0].mxu0 %v8516
  %v8636 = vpop.f32.mrb[0].mxu0
  %v8637 = vadd.f32 0.0, %v8636
  %v8638 = vpop.f32.mrb[0].mxu0
  %8639 = vmatprep.mubr.f32.mxu0 0.0
  %8640 = vmatmul.mubr.f32.gmra.mrb[0].mxu0 %v8519
  %v8641 = vpop.f32.mrb[0].mxu0
  %v8642 = vadd.f32 0.0, %v8641
  %v8643 = vpop.f32.mrb[0].mxu0
  %8644 = vmatprep.mubr.f32.mxu0 0.0
  %8645 = vmatmul.mubr.f32.gmra.mrb[0].mxu0 %v8522
  %v8646 = vpop.f32.mrb[0].mxu0
  %v8647 = vpop.f32.mrb[0].mxu0
  %8648 = vmatprep.mubr.f32.mxu0 0.0
  %8649 = vmatmul.mubr.f32.gmra.mrb[0].mxu0 %v8525
  %v8650 = vpop.f32.mrb[0].mxu0
  %v8651 = vadd.f32 0.0, %v8650
  %v8652 = vpop.f32.mrb[0].mxu0
  %8653 = vmatprep.mubr.f32.mxu0 0.0
  %8654 = vmatmul.mubr.f32.gmra.mrb[0].mxu0 %v8528
  %v8655 = vpop.f32.mrb[0].mxu0
  %v8656 = vadd.f32 0.0, %v8655
  %v8657 = vpop.f32.mrb[0].mxu0
  %8658 = vmatprep.mubr.f32.mxu0 0.0
  %8659 = vmatmul.mubr.f32.gmra.mrb[0].mxu0 %v8531
  %v8660 = vpop.f32.mrb[0].mxu0
  %v8661 = vadd.f32 0.0, %v8660
  %v8662 = vpop.f32.mrb[0].mxu0
  %8663 = vmatprep.mubr.f32.mxu0 0.0
  %8664 = vmatmul.mubr.f32.gmra.mrb[0].mxu0 %v8534
  %v8665 = vpop.f32.mrb[0].mxu0
  %v8666 = vadd.f32 0.0, %v8665
  %v8667 = vpop.f32.mrb[0].mxu0
  %8668 = vmatprep.mubr.f32.mxu0 0.0
  %8669 = vmatmul.mubr.f32.gmra.mrb[0].mxu0 %v8537
  %v8670 = vpop.f32.mrb[0].mxu0
  %v8671 = vadd.f32 0.0, %v8670
  %v8672 = vpop.f32.mrb[0].mxu0
  %8673 = vmatprep.mubr.f32.mxu0 0.0
  %8674 = vmatmul.mubr.f32.gmra.mrb[0].mxu0 %v8540
  %v8675 = vpop.f32.mrb[0].mxu0
  %v8676 = vadd.f32 0.0, %v8675
  %v8677 = vpop.f32.mrb[0].mxu0
  %8678 = vmatprep.mubr.f32.mxu0 0.0
  %8679 = vmatmul.mubr.f32.gmra.mrb[0].mxu0 %v8543
  %v8680 = vpop.f32.mrb[0].mxu0
  %v8681 = vadd.f32 0.0, %v8680
  %v8682 = vpop.f32.mrb[0].mxu0
  %8683 = vdwg.mxu0
  %v8684 = vadd.f32 %v8471, %v8612
  %v8685 = vadd.f32 %v8472, %v8617
  %v8686 = vadd.f32 %v8473, %v8622
  %v8687 = vadd.f32 %v8474, %v8627
  %v8688 = vadd.f32 %v8475, %v8632
  %v8689 = vadd.f32 %v8476, %v8637
  %v8690 = vadd.f32 %v8477, %v8642
  %v8691 = vadd.f32 %v8478, %v8651
  %v8692 = vadd.f32 %v8479, %v8656
  %v8693 = vadd.f32 %v8480, %v8661
  %v8694 = vadd.f32 %v8481, %v8666
  %v8695 = vadd.f32 %v8482, %v8671
  %v8696 = vadd.f32 %v8483, %v8676
  %v8697 = vadd.f32 %v8484, %v8681
  %v8698 = vadd.f32 %v8684, %v5568
  %v8699 = vadd.f32 %v8685, %v5568
  %v8700 = vadd.f32 %v8686, %v5568
  %v8701 = vadd.f32 %v8687, %v5568
  %v8702 = vadd.f32 %v8688, %v5568
  %v8703 = vadd.f32 %v8689, %v5568
  %v8704 = vadd.f32 %v8690, %v5568
  %v8705 = vadd.f32 %v8691, %v5568
  %v8706 = vadd.f32 %v8692, %v5568
  %v8707 = vadd.f32 %v8693, %v5568
  %v8708 = vadd.f32 %v8694, %v5568
  %v8709 = vadd.f32 %v8695, %v5568
  %v8710 = vadd.f32 %v8696, %v5568
  %v8711 = vadd.f32 %v8697, %v5568
  %v8712 = vmax.f32 %v8698, 0.0
  %v8713 = vmax.f32 %v8699, 0.0
  %v8714 = vmax.f32 %v8700, 0.0
  %v8715 = vmax.f32 %v8701, 0.0
  %v8716 = vmax.f32 %v8702, 0.0
  %v8717 = vmax.f32 %v8703, 0.0
  %v8718 = vmax.f32 %v8704, 0.0
  %v8719 = vmax.f32 %v8705, 0.0
  %v8720 = vmax.f32 %v8706, 0.0
  %v8721 = vmax.f32 %v8707, 0.0
  %v8722 = vmax.f32 %v8708, 0.0
  %v8723 = vmax.f32 %v8709, 0.0
  %v8724 = vmax.f32 %v8710, 0.0
  %v8725 = vmax.f32 %v8711, 0.0
  %v8726 = vmax.f32 %v7155, %v8712
  %v8727 = vmax.f32 %v7156, %v8713
  %v8728 = vmax.f32 %v7157, %v8714
  %v8729 = vmax.f32 %v7158, %v8715
  %v8730 = vmax.f32 %v7159, %v8716
  %v8731 = vmax.f32 %v7160, %v8717
  %v8732 = vmax.f32 %v7161, %v8718
  %v8733 = vmax.f32 %v7162, %v8719
  %v8734 = vmax.f32 %v7163, %v8720
  %v8735 = vmax.f32 %v7164, %v8721
  %v8736 = vmax.f32 %v7165, %v8722
  %v8737 = vmax.f32 %v7166, %v8723
  %v8738 = vmax.f32 %v7167, %v8724
  %v8739 = vmax.f32 %v7168, %v8725
  %8740 = vmatprep.subr.mxu0 0.0
  %8741 = vmatpush1.msra.mxu0 %v3666
  %8742 = vmatprep.subr.mxu0 0.0
  %8743 = vmatpush1.msra.mxu0 %v3667
  %8744 = vmatprep.subr.mxu0 0.0
  %8745 = vmatpush1.msra.mxu0 %v3668
  %8746 = vmatprep.subr.mxu0 0.0
  %8747 = vmatpush1.msra.mxu0 %v3669
  %8748 = vmatprep.subr.mxu0 0.0
  %8749 = vmatpush1.msra.mxu0 0.0
  %8750 = vmatprep.subr.mxu0 0.0
  %8751 = vmatpush1.msra.mxu0 0.0
  %8752 = vmatprep.subr.mxu0 0.0
  %8753 = vmatpush1.msra.mxu0 0.0
  %8754 = vmatprep.subr.mxu0 0.0
  %8755 = vmatpush1.msra.mxu0 0.0
  %8756 = vmatprep.subr.mxu0 0.0
  %8757 = vmatpush1.msra.mxu0 0.0
  %8758 = vmatprep.subr.mxu0 0.0
  %8759 = vmatpush1.msra.mxu0 0.0
  %8760 = vmatprep.subr.mxu0 0.0
  %8761 = vmatpush1.msra.mxu0 0.0
  %8762 = vmatprep.subr.mxu0 0.0
  %8763 = vmatpush1.msra.mxu0 0.0
  %8764 = vmatprep.subr.mxu0 0.0
  %8765 = vmatpush1.msra.mxu0 0.0
  %8766 = vmatprep.subr.mxu0 0.0
  %8767 = vmatpush1.msra.mxu0 0.0
  %8768 = vmatprep.subr.mxu0 0.0
  %8769 = vmatpush1.msra.mxu0 0.0
  %8770 = vmatprep.subr.mxu0 0.0
  %8771 = vmatpush1.msra.mxu0 0.0
  %8772 = vmatprep.subr.mxu0 0.0
  %8773 = vmatpush1.msra.mxu0 0.0
  %8774 = vmatprep.subr.mxu0 0.0
  %8775 = vmatpush1.msra.mxu0 0.0
  %8776 = vmatprep.subr.mxu0 0.0
  %8777 = vmatpush1.msra.mxu0 0.0
  %8778 = vmatprep.subr.mxu0 0.0
  %8779 = vmatpush1.msra.mxu0 0.0
  %8780 = vmatprep.subr.mxu0 0.0
  %8781 = vmatpush1.msra.mxu0 0.0
  %8782 = vmatprep.subr.mxu0 0.0
  %8783 = vmatpush1.msra.mxu0 0.0
  %8784 = vmatprep.subr.mxu0 0.0
  %8785 = vmatpush1.msra.mxu0 0.0
  %8786 = vmatprep.subr.mxu0 0.0
  %8787 = vmatpush1.msra.mxu0 0.0
  %8788 = vmatprep.subr.mxu0 0.0
  %8789 = vmatpush1.msra.mxu0 0.0
  %8790 = vmatprep.subr.mxu0 0.0
  %8791 = vmatpush1.msra.mxu0 0.0
  %8792 = vmatprep.subr.mxu0 0.0
  %8793 = vmatpush1.msra.mxu0 0.0
  %8794 = vmatprep.subr.mxu0 0.0
  %8795 = vmatpush1.msra.mxu0 0.0
  %8796 = vmatprep.subr.mxu0 0.0
  %8797 = vmatpush1.msra.mxu0 0.0
  %8798 = vmatprep.subr.mxu0 0.0
  %8799 = vmatpush1.msra.mxu0 0.0
  %8800 = vmatprep.subr.mxu0 0.0
  %8801 = vmatpush1.msra.mxu0 0.0
  %8802 = vmatprep.subr.mxu0 0.0
  %8803 = vmatpush1.msra.mxu0 0.0
  %8804 = vmatprep.mubr.f32.mxu0 0.0
  %8805 = vmatmul.mubr.f32.gmra.mrb[0].mxu0 %v4713
  %v8806 = vpop.f32.mrb[0].mxu0
  %v8807 = vadd.f32 0.0, %v8806
  %v8808 = vpop.f32.mrb[0].mxu0
  %8809 = vmatprep.mubr.f32.mxu0 0.0
  %8810 = vmatmul.mubr.f32.gmra.mrb[0].mxu0 %v4716
  %v8811 = vpop.f32.mrb[0].mxu0
  %v8812 = vadd.f32 0.0, %v8811
  %v8813 = vpop.f32.mrb[0].mxu0
  %8814 = vmatprep.mubr.f32.mxu0 0.0
  %8815 = vmatmul.mubr.f32.gmra.mrb[0].mxu0 %v4719
  %v8816 = vpop.f32.mrb[0].mxu0
  %v8817 = vadd.f32 0.0, %v8816
  %v8818 = vpop.f32.mrb[0].mxu0
  %8819 = vmatprep.mubr.f32.mxu0 0.0
  %8820 = vmatmul.mubr.f32.gmra.mrb[0].mxu0 %v4722
  %v8821 = vpop.f32.mrb[0].mxu0
  %v8822 = vadd.f32 0.0, %v8821
  %v8823 = vpop.f32.mrb[0].mxu0
  %8824 = vmatprep.mubr.f32.mxu0 0.0
  %8825 = vmatmul.mubr.f32.gmra.mrb[0].mxu0 %v4725
  %v8826 = vpop.f32.mrb[0].mxu0
  %v8827 = vadd.f32 0.0, %v8826
  %v8828 = vpop.f32.mrb[0].mxu0
  %8829 = vmatprep.mubr.f32.mxu0 0.0
  %8830 = vmatmul.mubr.f32.gmra.mrb[0].mxu0 %v4728
  %v8831 = vpop.f32.mrb[0].mxu0
  %v8832 = vadd.f32 0.0, %v8831
  %v8833 = vpop.f32.mrb[0].mxu0
  %8834 = vmatprep.mubr.f32.mxu0 0.0
  %8835 = vmatmul.mubr.f32.gmra.mrb[0].mxu0 %v4731
  %v8836 = vpop.f32.mrb[0].mxu0
  %v8837 = vadd.f32 0.0, %v8836
  %v8838 = vpop.f32.mrb[0].mxu0
  %8839 = vmatprep.mubr.f32.mxu0 0.0
  %8840 = vmatmul.mubr.f32.gmra.mrb[0].mxu0 %v4734
  %v8841 = vpop.f32.mrb[0].mxu0
  %v8842 = vpop.f32.mrb[0].mxu0
  %8843 = vmatprep.mubr.f32.mxu0 0.0
  %8844 = vmatmul.mubr.f32.gmra.mrb[0].mxu0 %v4737
  %v8845 = vpop.f32.mrb[0].mxu0
  %v8846 = vadd.f32 0.0, %v8845
  %v8847 = vpop.f32.mrb[0].mxu0
  %8848 = vmatprep.mubr.f32.mxu0 0.0
  %8849 = vmatmul.mubr.f32.gmra.mrb[0].mxu0 %v4740
  %v8850 = vpop.f32.mrb[0].mxu0
  %v8851 = vadd.f32 0.0, %v8850
  %v8852 = vpop.f32.mrb[0].mxu0
  %8853 = vmatprep.mubr.f32.mxu0 0.0
  %8854 = vmatmul.mubr.f32.gmra.mrb[0].mxu0 %v4743
  %v8855 = vpop.f32.mrb[0].mxu0
  %v8856 = vadd.f32 0.0, %v8855
  %v8857 = vpop.f32.mrb[0].mxu0
  %8858 = vmatprep.mubr.f32.mxu0 0.0
  %8859 = vmatmul.mubr.f32.gmra.mrb[0].mxu0 %v4746
  %v8860 = vpop.f32.mrb[0].mxu0
  %v8861 = vadd.f32 0.0, %v8860
  %v8862 = vpop.f32.mrb[0].mxu0
  %8863 = vmatprep.mubr.f32.mxu0 0.0
  %8864 = vmatmul.mubr.f32.gmra.mrb[0].mxu0 %v4749
  %v8865 = vpop.f32.mrb[0].mxu0
  %v8866 = vadd.f32 0.0, %v8865
  %v8867 = vpop.f32.mrb[0].mxu0
  %8868 = vmatprep.mubr.f32.mxu0 0.0
  %8869 = vmatmul.mubr.f32.gmra.mrb[0].mxu0 %v4752
  %v8870 = vpop.f32.mrb[0].mxu0
  %v8871 = vadd.f32 0.0, %v8870
  %v8872 = vpop.f32.mrb[0].mxu0
  %8873 = vmatprep.mubr.f32.mxu0 0.0
  %8874 = vmatmul.mubr.f32.gmra.mrb[0].mxu0 %v4755
  %v8875 = vpop.f32.mrb[0].mxu0
  %v8876 = vadd.f32 0.0, %v8875
  %v8877 = vpop.f32.mrb[0].mxu0
  %8878 = vdwg.mxu0
  %8879 = vmatprep.subr.mxu0 0.0
  %8880 = vmatpush1.msra.mxu0 %v3646
  %8881 = vmatprep.subr.mxu0 0.0
  %8882 = vmatpush1.msra.mxu0 %v3647
  %8883 = vmatprep.subr.mxu0 0.0
  %8884 = vmatpush1.msra.mxu0 %v3648
  %8885 = vmatprep.subr.mxu0 0.0
  %8886 = vmatpush1.msra.mxu0 %v3649
  %8887 = vmatprep.subr.mxu0 0.0
  %8888 = vmatpush1.msra.mxu0 0.0
  %8889 = vmatprep.subr.mxu0 0.0
  %8890 = vmatpush1.msra.mxu0 0.0
  %8891 = vmatprep.subr.mxu0 0.0
  %8892 = vmatpush1.msra.mxu0 0.0
  %8893 = vmatprep.subr.mxu0 0.0
  %8894 = vmatpush1.msra.mxu0 0.0
  %8895 = vmatprep.subr.mxu0 0.0
  %8896 = vmatpush1.msra.mxu0 0.0
  %8897 = vmatprep.subr.mxu0 0.0
  %8898 = vmatpush1.msra.mxu0 0.0
  %8899 = vmatprep.subr.mxu0 0.0
  %8900 = vmatpush1.msra.mxu0 0.0
  %8901 = vmatprep.subr.mxu0 0.0
  %8902 = vmatpush1.msra.mxu0 0.0
  %8903 = vmatprep.subr.mxu0 0.0
  %8904 = vmatpush1.msra.mxu0 0.0
  %8905 = vmatprep.subr.mxu0 0.0
  %8906 = vmatpush1.msra.mxu0 0.0
  %8907 = vmatprep.subr.mxu0 0.0
  %8908 = vmatpush1.msra.mxu0 0.0
  %8909 = vmatprep.subr.mxu0 0.0
  %8910 = vmatpush1.msra.mxu0 0.0
  %8911 = vmatprep.subr.mxu0 0.0
  %8912 = vmatpush1.msra.mxu0 0.0
  %8913 = vmatprep.subr.mxu0 0.0
  %8914 = vmatpush1.msra.mxu0 0.0
  %8915 = vmatprep.subr.mxu0 0.0
  %8916 = vmatpush1.msra.mxu0 0.0
  %8917 = vmatprep.subr.mxu0 0.0
  %8918 = vmatpush1.msra.mxu0 0.0
  %8919 = vmatprep.subr.mxu0 0.0
  %8920 = vmatpush1.msra.mxu0 0.0
  %8921 = vmatprep.subr.mxu0 0.0
  %8922 = vmatpush1.msra.mxu0 0.0
  %8923 = vmatprep.subr.mxu0 0.0
  %8924 = vmatpush1.msra.mxu0 0.0
  %8925 = vmatprep.subr.mxu0 0.0
  %8926 = vmatpush1.msra.mxu0 0.0
  %8927 = vmatprep.subr.mxu0 0.0
  %8928 = vmatpush1.msra.mxu0 0.0
  %8929 = vmatprep.subr.mxu0 0.0
  %8930 = vmatpush1.msra.mxu0 0.0
  %8931 = vmatprep.subr.mxu0 0.0
  %8932 = vmatpush1.msra.mxu0 0.0
  %8933 = vmatprep.subr.mxu0 0.0
  %8934 = vmatpush1.msra.mxu0 0.0
  %8935 = vmatprep.subr.mxu0 0.0
  %8936 = vmatpush1.msra.mxu0 0.0
  %8937 = vmatprep.subr.mxu0 0.0
  %8938 = vmatpush1.msra.mxu0 0.0
  %8939 = vmatprep.subr.mxu0 0.0
  %8940 = vmatpush1.msra.mxu0 0.0
  %8941 = vmatprep.subr.mxu0 0.0
  %8942 = vmatpush1.msra.mxu0 0.0
  %8943 = vmatprep.mubr.f32.mxu0 0.0
  %8944 = vmatmul.mubr.f32.gmra.mrb[0].mxu0 %v4495
  %v8945 = vpop.f32.mrb[0].mxu0
  %v8946 = vadd.f32 %v8807, %v8945
  %v8947 = vpop.f32.mrb[0].mxu0
  %8948 = vmatprep.mubr.f32.mxu0 0.0
  %8949 = vmatmul.mubr.f32.gmra.mrb[0].mxu0 %v4498
  %v8950 = vpop.f32.mrb[0].mxu0
  %v8951 = vadd.f32 %v8812, %v8950
  %v8952 = vpop.f32.mrb[0].mxu0
  %8953 = vmatprep.mubr.f32.mxu0 0.0
  %8954 = vmatmul.mubr.f32.gmra.mrb[0].mxu0 %v4501
  %v8955 = vpop.f32.mrb[0].mxu0
  %v8956 = vadd.f32 %v8817, %v8955
  %v8957 = vpop.f32.mrb[0].mxu0
  %8958 = vmatprep.mubr.f32.mxu0 0.0
  %8959 = vmatmul.mubr.f32.gmra.mrb[0].mxu0 %v4504
  %v8960 = vpop.f32.mrb[0].mxu0
  %v8961 = vadd.f32 %v8822, %v8960
  %v8962 = vpop.f32.mrb[0].mxu0
  %8963 = vmatprep.mubr.f32.mxu0 0.0
  %8964 = vmatmul.mubr.f32.gmra.mrb[0].mxu0 %v4507
  %v8965 = vpop.f32.mrb[0].mxu0
  %v8966 = vadd.f32 %v8827, %v8965
  %v8967 = vpop.f32.mrb[0].mxu0
  %8968 = vmatprep.mubr.f32.mxu0 0.0
  %8969 = vmatmul.mubr.f32.gmra.mrb[0].mxu0 %v4510
  %v8970 = vpop.f32.mrb[0].mxu0
  %v8971 = vadd.f32 %v8832, %v8970
  %v8972 = vpop.f32.mrb[0].mxu0
  %8973 = vmatprep.mubr.f32.mxu0 0.0
  %8974 = vmatmul.mubr.f32.gmra.mrb[0].mxu0 %v4513
  %v8975 = vpop.f32.mrb[0].mxu0
  %v8976 = vadd.f32 %v8837, %v8975
  %v8977 = vpop.f32.mrb[0].mxu0
  %8978 = vmatprep.mubr.f32.mxu0 0.0
  %8979 = vmatmul.mubr.f32.gmra.mrb[0].mxu0 %v4516
  %v8980 = vpop.f32.mrb[0].mxu0
  %v8981 = vpop.f32.mrb[0].mxu0
  %8982 = vmatprep.mubr.f32.mxu0 0.0
  %8983 = vmatmul.mubr.f32.gmra.mrb[0].mxu0 %v4519
  %v8984 = vpop.f32.mrb[0].mxu0
  %v8985 = vadd.f32 %v8846, %v8984
  %v8986 = vpop.f32.mrb[0].mxu0
  %8987 = vmatprep.mubr.f32.mxu0 0.0
  %8988 = vmatmul.mubr.f32.gmra.mrb[0].mxu0 %v4522
  %v8989 = vpop.f32.mrb[0].mxu0
  %v8990 = vadd.f32 %v8851, %v8989
  %v8991 = vpop.f32.mrb[0].mxu0
  %8992 = vmatprep.mubr.f32.mxu0 0.0
  %8993 = vmatmul.mubr.f32.gmra.mrb[0].mxu0 %v4525
  %v8994 = vpop.f32.mrb[0].mxu0
  %v8995 = vadd.f32 %v8856, %v8994
  %v8996 = vpop.f32.mrb[0].mxu0
  %8997 = vmatprep.mubr.f32.mxu0 0.0
  %8998 = vmatmul.mubr.f32.gmra.mrb[0].mxu0 %v4528
  %v8999 = vpop.f32.mrb[0].mxu0
  %v9000 = vadd.f32 %v8861, %v8999
  %v9001 = vpop.f32.mrb[0].mxu0
  %9002 = vmatprep.mubr.f32.mxu0 0.0
  %9003 = vmatmul.mubr.f32.gmra.mrb[0].mxu0 %v4531
  %v9004 = vpop.f32.mrb[0].mxu0
  %v9005 = vadd.f32 %v8866, %v9004
  %v9006 = vpop.f32.mrb[0].mxu0
  %9007 = vmatprep.mubr.f32.mxu0 0.0
  %9008 = vmatmul.mubr.f32.gmra.mrb[0].mxu0 %v4534
  %v9009 = vpop.f32.mrb[0].mxu0
  %v9010 = vadd.f32 %v8871, %v9009
  %v9011 = vpop.f32.mrb[0].mxu0
  %9012 = vmatprep.mubr.f32.mxu0 0.0
  %9013 = vmatmul.mubr.f32.gmra.mrb[0].mxu0 %v4537
  %v9014 = vpop.f32.mrb[0].mxu0
  %v9015 = vadd.f32 %v8876, %v9014
  %v9016 = vpop.f32.mrb[0].mxu0
  %9017 = vdwg.mxu0
  %9018 = vmatprep.subr.mxu0 0.0
  %9019 = vmatpush1.msra.mxu0 %v4054
  %9020 = vmatprep.subr.mxu0 0.0
  %9021 = vmatpush1.msra.mxu0 %v4055
  %9022 = vmatprep.subr.mxu0 0.0
  %9023 = vmatpush1.msra.mxu0 %v4056
  %9024 = vmatprep.subr.mxu0 0.0
  %9025 = vmatpush1.msra.mxu0 %v4057
  %9026 = vmatprep.subr.mxu0 0.0
  %9027 = vmatpush1.msra.mxu0 0.0
  %9028 = vmatprep.subr.mxu0 0.0
  %9029 = vmatpush1.msra.mxu0 0.0
  %9030 = vmatprep.subr.mxu0 0.0
  %9031 = vmatpush1.msra.mxu0 0.0
  %9032 = vmatprep.subr.mxu0 0.0
  %9033 = vmatpush1.msra.mxu0 0.0
  %9034 = vmatprep.subr.mxu0 0.0
  %9035 = vmatpush1.msra.mxu0 0.0
  %9036 = vmatprep.subr.mxu0 0.0
  %9037 = vmatpush1.msra.mxu0 0.0
  %9038 = vmatprep.subr.mxu0 0.0
  %9039 = vmatpush1.msra.mxu0 0.0
  %9040 = vmatprep.subr.mxu0 0.0
  %9041 = vmatpush1.msra.mxu0 0.0
  %9042 = vmatprep.subr.mxu0 0.0
  %9043 = vmatpush1.msra.mxu0 0.0
  %9044 = vmatprep.subr.mxu0 0.0
  %9045 = vmatpush1.msra.mxu0 0.0
  %9046 = vmatprep.subr.mxu0 0.0
  %9047 = vmatpush1.msra.mxu0 0.0
  %9048 = vmatprep.subr.mxu0 0.0
  %9049 = vmatpush1.msra.mxu0 0.0
  %9050 = vmatprep.subr.mxu0 0.0
  %9051 = vmatpush1.msra.mxu0 0.0
  %9052 = vmatprep.subr.mxu0 0.0
  %9053 = vmatpush1.msra.mxu0 0.0
  %9054 = vmatprep.subr.mxu0 0.0
  %9055 = vmatpush1.msra.mxu0 0.0
  %9056 = vmatprep.subr.mxu0 0.0
  %9057 = vmatpush1.msra.mxu0 0.0
  %9058 = vmatprep.subr.mxu0 0.0
  %9059 = vmatpush1.msra.mxu0 0.0
  %9060 = vmatprep.subr.mxu0 0.0
  %9061 = vmatpush1.msra.mxu0 0.0
  %9062 = vmatprep.subr.mxu0 0.0
  %9063 = vmatpush1.msra.mxu0 0.0
  %9064 = vmatprep.subr.mxu0 0.0
  %9065 = vmatpush1.msra.mxu0 0.0
  %9066 = vmatprep.subr.mxu0 0.0
  %9067 = vmatpush1.msra.mxu0 0.0
  %9068 = vmatprep.subr.mxu0 0.0
  %9069 = vmatpush1.msra.mxu0 0.0
  %9070 = vmatprep.subr.mxu0 0.0
  %9071 = vmatpush1.msra.mxu0 0.0
  %9072 = vmatprep.subr.mxu0 0.0
  %9073 = vmatpush1.msra.mxu0 0.0
  %9074 = vmatprep.subr.mxu0 0.0
  %9075 = vmatpush1.msra.mxu0 0.0
  %9076 = vmatprep.subr.mxu0 0.0
  %9077 = vmatpush1.msra.mxu0 0.0
  %9078 = vmatprep.subr.mxu0 0.0
  %9079 = vmatpush1.msra.mxu0 0.0
  %9080 = vmatprep.subr.mxu0 0.0
  %9081 = vmatpush1.msra.mxu0 0.0
  %9082 = vmatprep.mubr.f32.mxu0 0.0
  %9083 = vmatmul.mubr.f32.gmra.mrb[0].mxu0 %v6411
  %v9084 = vpop.f32.mrb[0].mxu0
  %v9085 = vadd.f32 0.0, %v9084
  %v9086 = vpop.f32.mrb[0].mxu0
  %9087 = vmatprep.mubr.f32.mxu0 0.0
  %9088 = vmatmul.mubr.f32.gmra.mrb[0].mxu0 %v6414
  %v9089 = vpop.f32.mrb[0].mxu0
  %v9090 = vadd.f32 0.0, %v9089
  %v9091 = vpop.f32.mrb[0].mxu0
  %9092 = vmatprep.mubr.f32.mxu0 0.0
  %9093 = vmatmul.mubr.f32.gmra.mrb[0].mxu0 %v6417
  %v9094 = vpop.f32.mrb[0].mxu0
  %v9095 = vadd.f32 0.0, %v9094
  %v9096 = vpop.f32.mrb[0].mxu0
  %9097 = vmatprep.mubr.f32.mxu0 0.0
  %9098 = vmatmul.mubr.f32.gmra.mrb[0].mxu0 %v6420
  %v9099 = vpop.f32.mrb[0].mxu0
  %v9100 = vadd.f32 0.0, %v9099
  %v9101 = vpop.f32.mrb[0].mxu0
  %9102 = vmatprep.mubr.f32.mxu0 0.0
  %9103 = vmatmul.mubr.f32.gmra.mrb[0].mxu0 %v6423
  %v9104 = vpop.f32.mrb[0].mxu0
  %v9105 = vadd.f32 0.0, %v9104
  %v9106 = vpop.f32.mrb[0].mxu0
  %9107 = vmatprep.mubr.f32.mxu0 0.0
  %9108 = vmatmul.mubr.f32.gmra.mrb[0].mxu0 %v6426
  %v9109 = vpop.f32.mrb[0].mxu0
  %v9110 = vadd.f32 0.0, %v9109
  %v9111 = vpop.f32.mrb[0].mxu0
  %9112 = vmatprep.mubr.f32.mxu0 0.0
  %9113 = vmatmul.mubr.f32.gmra.mrb[0].mxu0 %v6429
  %v9114 = vpop.f32.mrb[0].mxu0
  %v9115 = vadd.f32 0.0, %v9114
  %v9116 = vpop.f32.mrb[0].mxu0
  %9117 = vmatprep.mubr.f32.mxu0 0.0
  %9118 = vmatmul.mubr.f32.gmra.mrb[0].mxu0 %v6432
  %v9119 = vpop.f32.mrb[0].mxu0
  %v9120 = vpop.f32.mrb[0].mxu0
  %9121 = vmatprep.mubr.f32.mxu0 0.0
  %9122 = vmatmul.mubr.f32.gmra.mrb[0].mxu0 %v6435
  %v9123 = vpop.f32.mrb[0].mxu0
  %v9124 = vadd.f32 0.0, %v9123
  %v9125 = vpop.f32.mrb[0].mxu0
  %9126 = vmatprep.mubr.f32.mxu0 0.0
  %9127 = vmatmul.mubr.f32.gmra.mrb[0].mxu0 %v6438
  %v9128 = vpop.f32.mrb[0].mxu0
  %v9129 = vadd.f32 0.0, %v9128
  %v9130 = vpop.f32.mrb[0].mxu0
  %9131 = vmatprep.mubr.f32.mxu0 0.0
  %9132 = vmatmul.mubr.f32.gmra.mrb[0].mxu0 %v6441
  %v9133 = vpop.f32.mrb[0].mxu0
  %v9134 = vadd.f32 0.0, %v9133
  %v9135 = vpop.f32.mrb[0].mxu0
  %9136 = vmatprep.mubr.f32.mxu0 0.0
  %9137 = vmatmul.mubr.f32.gmra.mrb[0].mxu0 %v6444
  %v9138 = vpop.f32.mrb[0].mxu0
  %v9139 = vadd.f32 0.0, %v9138
  %v9140 = vpop.f32.mrb[0].mxu0
  %9141 = vmatprep.mubr.f32.mxu0 0.0
  %9142 = vmatmul.mubr.f32.gmra.mrb[0].mxu0 %v6447
  %v9143 = vpop.f32.mrb[0].mxu0
  %v9144 = vadd.f32 0.0, %v9143
  %v9145 = vpop.f32.mrb[0].mxu0
  %9146 = vmatprep.mubr.f32.mxu0 0.0
  %9147 = vmatmul.mubr.f32.gmra.mrb[0].mxu0 %v6450
  %v9148 = vpop.f32.mrb[0].mxu0
  %v9149 = vadd.f32 0.0, %v9148
  %v9150 = vpop.f32.mrb[0].mxu0
  %9151 = vmatprep.mubr.f32.mxu0 0.0
  %9152 = vmatmul.mubr.f32.gmra.mrb[0].mxu0 %v6453
  %v9153 = vpop.f32.mrb[0].mxu0
  %v9154 = vadd.f32 0.0, %v9153
  %v9155 = vpop.f32.mrb[0].mxu0
  %9156 = vdwg.mxu0
  %v9157 = vadd.f32 %v8946, %v9085
  %v9158 = vadd.f32 %v8951, %v9090
  %v9159 = vadd.f32 %v8956, %v9095
  %v9160 = vadd.f32 %v8961, %v9100
  %v9161 = vadd.f32 %v8966, %v9105
  %v9162 = vadd.f32 %v8971, %v9110
  %v9163 = vadd.f32 %v8976, %v9115
  %v9164 = vadd.f32 %v8985, %v9124
  %v9165 = vadd.f32 %v8990, %v9129
  %v9166 = vadd.f32 %v8995, %v9134
  %v9167 = vadd.f32 %v9000, %v9139
  %v9168 = vadd.f32 %v9005, %v9144
  %v9169 = vadd.f32 %v9010, %v9149
  %v9170 = vadd.f32 %v9015, %v9154
  %9171 = vmatprep.subr.mxu0 0.0
  %9172 = vmatpush1.msra.mxu0 %v4272
  %9173 = vmatprep.subr.mxu0 0.0
  %9174 = vmatpush1.msra.mxu0 %v4273
  %9175 = vmatprep.subr.mxu0 0.0
  %9176 = vmatpush1.msra.mxu0 %v4274
  %9177 = vmatprep.subr.mxu0 0.0
  %9178 = vmatpush1.msra.mxu0 %v4275
  %9179 = vmatprep.subr.mxu0 0.0
  %9180 = vmatpush1.msra.mxu0 0.0
  %9181 = vmatprep.subr.mxu0 0.0
  %9182 = vmatpush1.msra.mxu0 0.0
  %9183 = vmatprep.subr.mxu0 0.0
  %9184 = vmatpush1.msra.mxu0 0.0
  %9185 = vmatprep.subr.mxu0 0.0
  %9186 = vmatpush1.msra.mxu0 0.0
  %9187 = vmatprep.subr.mxu0 0.0
  %9188 = vmatpush1.msra.mxu0 0.0
  %9189 = vmatprep.subr.mxu0 0.0
  %9190 = vmatpush1.msra.mxu0 0.0
  %9191 = vmatprep.subr.mxu0 0.0
  %9192 = vmatpush1.msra.mxu0 0.0
  %9193 = vmatprep.subr.mxu0 0.0
  %9194 = vmatpush1.msra.mxu0 0.0
  %9195 = vmatprep.subr.mxu0 0.0
  %9196 = vmatpush1.msra.mxu0 0.0
  %9197 = vmatprep.subr.mxu0 0.0
  %9198 = vmatpush1.msra.mxu0 0.0
  %9199 = vmatprep.subr.mxu0 0.0
  %9200 = vmatpush1.msra.mxu0 0.0
  %9201 = vmatprep.subr.mxu0 0.0
  %9202 = vmatpush1.msra.mxu0 0.0
  %9203 = vmatprep.subr.mxu0 0.0
  %9204 = vmatpush1.msra.mxu0 0.0
  %9205 = vmatprep.subr.mxu0 0.0
  %9206 = vmatpush1.msra.mxu0 0.0
  %9207 = vmatprep.subr.mxu0 0.0
  %9208 = vmatpush1.msra.mxu0 0.0
  %9209 = vmatprep.subr.mxu0 0.0
  %9210 = vmatpush1.msra.mxu0 0.0
  %9211 = vmatprep.subr.mxu0 0.0
  %9212 = vmatpush1.msra.mxu0 0.0
  %9213 = vmatprep.subr.mxu0 0.0
  %9214 = vmatpush1.msra.mxu0 0.0
  %9215 = vmatprep.subr.mxu0 0.0
  %9216 = vmatpush1.msra.mxu0 0.0
  %9217 = vmatprep.subr.mxu0 0.0
  %9218 = vmatpush1.msra.mxu0 0.0
  %9219 = vmatprep.subr.mxu0 0.0
  %9220 = vmatpush1.msra.mxu0 0.0
  %9221 = vmatprep.subr.mxu0 0.0
  %9222 = vmatpush1.msra.mxu0 0.0
  %9223 = vmatprep.subr.mxu0 0.0
  %9224 = vmatpush1.msra.mxu0 0.0
  %9225 = vmatprep.subr.mxu0 0.0
  %9226 = vmatpush1.msra.mxu0 0.0
  %9227 = vmatprep.subr.mxu0 0.0
  %9228 = vmatpush1.msra.mxu0 0.0
  %9229 = vmatprep.subr.mxu0 0.0
  %9230 = vmatpush1.msra.mxu0 0.0
  %9231 = vmatprep.subr.mxu0 0.0
  %9232 = vmatpush1.msra.mxu0 0.0
  %9233 = vmatprep.subr.mxu0 0.0
  %9234 = vmatpush1.msra.mxu0 0.0
  %9235 = vmatprep.mubr.f32.mxu0 0.0
  %9236 = vmatmul.mubr.f32.gmra.mrb[0].mxu0 %v5149
  %v9237 = vpop.f32.mrb[0].mxu0
  %v9238 = vadd.f32 0.0, %v9237
  %v9239 = vpop.f32.mrb[0].mxu0
  %9240 = vmatprep.mubr.f32.mxu0 0.0
  %9241 = vmatmul.mubr.f32.gmra.mrb[0].mxu0 %v5152
  %v9242 = vpop.f32.mrb[0].mxu0
  %v9243 = vadd.f32 0.0, %v9242
  %v9244 = vpop.f32.mrb[0].mxu0
  %9245 = vmatprep.mubr.f32.mxu0 0.0
  %9246 = vmatmul.mubr.f32.gmra.mrb[0].mxu0 %v5155
  %v9247 = vpop.f32.mrb[0].mxu0
  %v9248 = vadd.f32 0.0, %v9247
  %v9249 = vpop.f32.mrb[0].mxu0
  %9250 = vmatprep.mubr.f32.mxu0 0.0
  %9251 = vmatmul.mubr.f32.gmra.mrb[0].mxu0 %v5158
  %v9252 = vpop.f32.mrb[0].mxu0
  %v9253 = vadd.f32 0.0, %v9252
  %v9254 = vpop.f32.mrb[0].mxu0
  %9255 = vmatprep.mubr.f32.mxu0 0.0
  %9256 = vmatmul.mubr.f32.gmra.mrb[0].mxu0 %v5161
  %v9257 = vpop.f32.mrb[0].mxu0
  %v9258 = vadd.f32 0.0, %v9257
  %v9259 = vpop.f32.mrb[0].mxu0
  %9260 = vmatprep.mubr.f32.mxu0 0.0
  %9261 = vmatmul.mubr.f32.gmra.mrb[0].mxu0 %v5164
  %v9262 = vpop.f32.mrb[0].mxu0
  %v9263 = vadd.f32 0.0, %v9262
  %v9264 = vpop.f32.mrb[0].mxu0
  %9265 = vmatprep.mubr.f32.mxu0 0.0
  %9266 = vmatmul.mubr.f32.gmra.mrb[0].mxu0 %v5167
  %v9267 = vpop.f32.mrb[0].mxu0
  %v9268 = vadd.f32 0.0, %v9267
  %v9269 = vpop.f32.mrb[0].mxu0
  %9270 = vmatprep.mubr.f32.mxu0 0.0
  %9271 = vmatmul.mubr.f32.gmra.mrb[0].mxu0 %v5170
  %v9272 = vpop.f32.mrb[0].mxu0
  %v9273 = vpop.f32.mrb[0].mxu0
  %9274 = vmatprep.mubr.f32.mxu0 0.0
  %9275 = vmatmul.mubr.f32.gmra.mrb[0].mxu0 %v5173
  %v9276 = vpop.f32.mrb[0].mxu0
  %v9277 = vadd.f32 0.0, %v9276
  %v9278 = vpop.f32.mrb[0].mxu0
  %9279 = vmatprep.mubr.f32.mxu0 0.0
  %9280 = vmatmul.mubr.f32.gmra.mrb[0].mxu0 %v5176
  %v9281 = vpop.f32.mrb[0].mxu0
  %v9282 = vadd.f32 0.0, %v9281
  %v9283 = vpop.f32.mrb[0].mxu0
  %9284 = vmatprep.mubr.f32.mxu0 0.0
  %9285 = vmatmul.mubr.f32.gmra.mrb[0].mxu0 %v5179
  %v9286 = vpop.f32.mrb[0].mxu0
  %v9287 = vadd.f32 0.0, %v9286
  %v9288 = vpop.f32.mrb[0].mxu0
  %9289 = vmatprep.mubr.f32.mxu0 0.0
  %9290 = vmatmul.mubr.f32.gmra.mrb[0].mxu0 %v5182
  %v9291 = vpop.f32.mrb[0].mxu0
  %v9292 = vadd.f32 0.0, %v9291
  %v9293 = vpop.f32.mrb[0].mxu0
  %9294 = vmatprep.mubr.f32.mxu0 0.0
  %9295 = vmatmul.mubr.f32.gmra.mrb[0].mxu0 %v5185
  %v9296 = vpop.f32.mrb[0].mxu0
  %v9297 = vadd.f32 0.0, %v9296
  %v9298 = vpop.f32.mrb[0].mxu0
  %9299 = vmatprep.mubr.f32.mxu0 0.0
  %9300 = vmatmul.mubr.f32.gmra.mrb[0].mxu0 %v5188
  %v9301 = vpop.f32.mrb[0].mxu0
  %v9302 = vadd.f32 0.0, %v9301
  %v9303 = vpop.f32.mrb[0].mxu0
  %9304 = vmatprep.mubr.f32.mxu0 0.0
  %9305 = vmatmul.mubr.f32.gmra.mrb[0].mxu0 %v5191
  %v9306 = vpop.f32.mrb[0].mxu0
  %v9307 = vadd.f32 0.0, %v9306
  %v9308 = vpop.f32.mrb[0].mxu0
  %9309 = vdwg.mxu0
  %v9310 = vadd.f32 %v9157, %v9238
  %v9311 = vadd.f32 %v9158, %v9243
  %v9312 = vadd.f32 %v9159, %v9248
  %v9313 = vadd.f32 %v9160, %v9253
  %v9314 = vadd.f32 %v9161, %v9258
  %v9315 = vadd.f32 %v9162, %v9263
  %v9316 = vadd.f32 %v9163, %v9268
  %v9317 = vadd.f32 %v9164, %v9277
  %v9318 = vadd.f32 %v9165, %v9282
  %v9319 = vadd.f32 %v9166, %v9287
  %v9320 = vadd.f32 %v9167, %v9292
  %v9321 = vadd.f32 %v9168, %v9297
  %v9322 = vadd.f32 %v9169, %v9302
  %v9323 = vadd.f32 %v9170, %v9307
  %9324 = vmatprep.subr.mxu0 0.0
  %9325 = vmatpush1.msra.mxu0 %v4490
  %9326 = vmatprep.subr.mxu0 0.0
  %9327 = vmatpush1.msra.mxu0 %v4491
  %9328 = vmatprep.subr.mxu0 0.0
  %9329 = vmatpush1.msra.mxu0 %v4492
  %9330 = vmatprep.subr.mxu0 0.0
  %9331 = vmatpush1.msra.mxu0 %v4493
  %9332 = vmatprep.subr.mxu0 0.0
  %9333 = vmatpush1.msra.mxu0 0.0
  %9334 = vmatprep.subr.mxu0 0.0
  %9335 = vmatpush1.msra.mxu0 0.0
  %9336 = vmatprep.subr.mxu0 0.0
  %9337 = vmatpush1.msra.mxu0 0.0
  %9338 = vmatprep.subr.mxu0 0.0
  %9339 = vmatpush1.msra.mxu0 0.0
  %9340 = vmatprep.subr.mxu0 0.0
  %9341 = vmatpush1.msra.mxu0 0.0
  %9342 = vmatprep.subr.mxu0 0.0
  %9343 = vmatpush1.msra.mxu0 0.0
  %9344 = vmatprep.subr.mxu0 0.0
  %9345 = vmatpush1.msra.mxu0 0.0
  %9346 = vmatprep.subr.mxu0 0.0
  %9347 = vmatpush1.msra.mxu0 0.0
  %9348 = vmatprep.subr.mxu0 0.0
  %9349 = vmatpush1.msra.mxu0 0.0
  %9350 = vmatprep.subr.mxu0 0.0
  %9351 = vmatpush1.msra.mxu0 0.0
  %9352 = vmatprep.subr.mxu0 0.0
  %9353 = vmatpush1.msra.mxu0 0.0
  %9354 = vmatprep.subr.mxu0 0.0
  %9355 = vmatpush1.msra.mxu0 0.0
  %9356 = vmatprep.subr.mxu0 0.0
  %9357 = vmatpush1.msra.mxu0 0.0
  %9358 = vmatprep.subr.mxu0 0.0
  %9359 = vmatpush1.msra.mxu0 0.0
  %9360 = vmatprep.subr.mxu0 0.0
  %9361 = vmatpush1.msra.mxu0 0.0
  %9362 = vmatprep.subr.mxu0 0.0
  %9363 = vmatpush1.msra.mxu0 0.0
  %9364 = vmatprep.subr.mxu0 0.0
  %9365 = vmatpush1.msra.mxu0 0.0
  %9366 = vmatprep.subr.mxu0 0.0
  %9367 = vmatpush1.msra.mxu0 0.0
  %9368 = vmatprep.subr.mxu0 0.0
  %9369 = vmatpush1.msra.mxu0 0.0
  %9370 = vmatprep.subr.mxu0 0.0
  %9371 = vmatpush1.msra.mxu0 0.0
  %9372 = vmatprep.subr.mxu0 0.0
  %9373 = vmatpush1.msra.mxu0 0.0
  %9374 = vmatprep.subr.mxu0 0.0
  %9375 = vmatpush1.msra.mxu0 0.0
  %9376 = vmatprep.subr.mxu0 0.0
  %9377 = vmatpush1.msra.mxu0 0.0
  %9378 = vmatprep.subr.mxu0 0.0
  %9379 = vmatpush1.msra.mxu0 0.0
  %9380 = vmatprep.subr.mxu0 0.0
  %9381 = vmatpush1.msra.mxu0 0.0
  %9382 = vmatprep.subr.mxu0 0.0
  %9383 = vmatpush1.msra.mxu0 0.0
  %9384 = vmatprep.subr.mxu0 0.0
  %9385 = vmatpush1.msra.mxu0 0.0
  %9386 = vmatprep.subr.mxu0 0.0
  %9387 = vmatpush1.msra.mxu0 0.0
  %9388 = vmatprep.mubr.f32.mxu0 0.0
  %9389 = vmatmul.mubr.f32.gmra.mrb[0].mxu0 %v5367
  %v9390 = vpop.f32.mrb[0].mxu0
  %v9391 = vadd.f32 0.0, %v9390
  %v9392 = vpop.f32.mrb[0].mxu0
  %9393 = vmatprep.mubr.f32.mxu0 0.0
  %9394 = vmatmul.mubr.f32.gmra.mrb[0].mxu0 %v5370
  %v9395 = vpop.f32.mrb[0].mxu0
  %v9396 = vadd.f32 0.0, %v9395
  %v9397 = vpop.f32.mrb[0].mxu0
  %9398 = vmatprep.mubr.f32.mxu0 0.0
  %9399 = vmatmul.mubr.f32.gmra.mrb[0].mxu0 %v5373
  %v9400 = vpop.f32.mrb[0].mxu0
  %v9401 = vadd.f32 0.0, %v9400
  %v9402 = vpop.f32.mrb[0].mxu0
  %9403 = vmatprep.mubr.f32.mxu0 0.0
  %9404 = vmatmul.mubr.f32.gmra.mrb[0].mxu0 %v5376
  %v9405 = vpop.f32.mrb[0].mxu0
  %v9406 = vadd.f32 0.0, %v9405
  %v9407 = vpop.f32.mrb[0].mxu0
  %9408 = vmatprep.mubr.f32.mxu0 0.0
  %9409 = vmatmul.mubr.f32.gmra.mrb[0].mxu0 %v5379
  %v9410 = vpop.f32.mrb[0].mxu0
  %v9411 = vadd.f32 0.0, %v9410
  %v9412 = vpop.f32.mrb[0].mxu0
  %9413 = vmatprep.mubr.f32.mxu0 0.0
  %9414 = vmatmul.mubr.f32.gmra.mrb[0].mxu0 %v5382
  %v9415 = vpop.f32.mrb[0].mxu0
  %v9416 = vadd.f32 0.0, %v9415
  %v9417 = vpop.f32.mrb[0].mxu0
  %9418 = vmatprep.mubr.f32.mxu0 0.0
  %9419 = vmatmul.mubr.f32.gmra.mrb[0].mxu0 %v5385
  %v9420 = vpop.f32.mrb[0].mxu0
  %v9421 = vadd.f32 0.0, %v9420
  %v9422 = vpop.f32.mrb[0].mxu0
  %9423 = vmatprep.mubr.f32.mxu0 0.0
  %9424 = vmatmul.mubr.f32.gmra.mrb[0].mxu0 %v5388
  %v9425 = vpop.f32.mrb[0].mxu0
  %v9426 = vpop.f32.mrb[0].mxu0
  %9427 = vmatprep.mubr.f32.mxu0 0.0
  %9428 = vmatmul.mubr.f32.gmra.mrb[0].mxu0 %v5391
  %v9429 = vpop.f32.mrb[0].mxu0
  %v9430 = vadd.f32 0.0, %v9429
  %v9431 = vpop.f32.mrb[0].mxu0
  %9432 = vmatprep.mubr.f32.mxu0 0.0
  %9433 = vmatmul.mubr.f32.gmra.mrb[0].mxu0 %v5394
  %v9434 = vpop.f32.mrb[0].mxu0
  %v9435 = vadd.f32 0.0, %v9434
  %v9436 = vpop.f32.mrb[0].mxu0
  %9437 = vmatprep.mubr.f32.mxu0 0.0
  %9438 = vmatmul.mubr.f32.gmra.mrb[0].mxu0 %v5397
  %v9439 = vpop.f32.mrb[0].mxu0
  %v9440 = vadd.f32 0.0, %v9439
  %v9441 = vpop.f32.mrb[0].mxu0
  %9442 = vmatprep.mubr.f32.mxu0 0.0
  %9443 = vmatmul.mubr.f32.gmra.mrb[0].mxu0 %v5400
  %v9444 = vpop.f32.mrb[0].mxu0
  %v9445 = vadd.f32 0.0, %v9444
  %v9446 = vpop.f32.mrb[0].mxu0
  %9447 = vmatprep.mubr.f32.mxu0 0.0
  %9448 = vmatmul.mubr.f32.gmra.mrb[0].mxu0 %v5403
  %v9449 = vpop.f32.mrb[0].mxu0
  %v9450 = vadd.f32 0.0, %v9449
  %v9451 = vpop.f32.mrb[0].mxu0
  %9452 = vmatprep.mubr.f32.mxu0 0.0
  %9453 = vmatmul.mubr.f32.gmra.mrb[0].mxu0 %v5406
  %v9454 = vpop.f32.mrb[0].mxu0
  %v9455 = vadd.f32 0.0, %v9454
  %v9456 = vpop.f32.mrb[0].mxu0
  %9457 = vmatprep.mubr.f32.mxu0 0.0
  %9458 = vmatmul.mubr.f32.gmra.mrb[0].mxu0 %v5409
  %v9459 = vpop.f32.mrb[0].mxu0
  %v9460 = vadd.f32 0.0, %v9459
  %v9461 = vpop.f32.mrb[0].mxu0
  %9462 = vdwg.mxu0
  %v9463 = vadd.f32 %v9310, %v9391
  %v9464 = vadd.f32 %v9311, %v9396
  %v9465 = vadd.f32 %v9312, %v9401
  %v9466 = vadd.f32 %v9313, %v9406
  %v9467 = vadd.f32 %v9314, %v9411
  %v9468 = vadd.f32 %v9315, %v9416
  %v9469 = vadd.f32 %v9316, %v9421
  %v9470 = vadd.f32 %v9317, %v9430
  %v9471 = vadd.f32 %v9318, %v9435
  %v9472 = vadd.f32 %v9319, %v9440
  %v9473 = vadd.f32 %v9320, %v9445
  %v9474 = vadd.f32 %v9321, %v9450
  %v9475 = vadd.f32 %v9322, %v9455
  %v9476 = vadd.f32 %v9323, %v9460
  %9477 = vmatprep.subr.mxu0 0.0
  %9478 = vmatpush1.msra.mxu0 %v4708
  %9479 = vmatprep.subr.mxu0 0.0
  %9480 = vmatpush1.msra.mxu0 %v4709
  %9481 = vmatprep.subr.mxu0 0.0
  %9482 = vmatpush1.msra.mxu0 %v4710
  %9483 = vmatprep.subr.mxu0 0.0
  %9484 = vmatpush1.msra.mxu0 %v4711
  %9485 = vmatprep.subr.mxu0 0.0
  %9486 = vmatpush1.msra.mxu0 0.0
  %9487 = vmatprep.subr.mxu0 0.0
  %9488 = vmatpush1.msra.mxu0 0.0
  %9489 = vmatprep.subr.mxu0 0.0
  %9490 = vmatpush1.msra.mxu0 0.0
  %9491 = vmatprep.subr.mxu0 0.0
  %9492 = vmatpush1.msra.mxu0 0.0
  %9493 = vmatprep.subr.mxu0 0.0
  %9494 = vmatpush1.msra.mxu0 0.0
  %9495 = vmatprep.subr.mxu0 0.0
  %9496 = vmatpush1.msra.mxu0 0.0
  %9497 = vmatprep.subr.mxu0 0.0
  %9498 = vmatpush1.msra.mxu0 0.0
  %9499 = vmatprep.subr.mxu0 0.0
  %9500 = vmatpush1.msra.mxu0 0.0
  %9501 = vmatprep.subr.mxu0 0.0
  %9502 = vmatpush1.msra.mxu0 0.0
  %9503 = vmatprep.subr.mxu0 0.0
  %9504 = vmatpush1.msra.mxu0 0.0
  %9505 = vmatprep.subr.mxu0 0.0
  %9506 = vmatpush1.msra.mxu0 0.0
  %9507 = vmatprep.subr.mxu0 0.0
  %9508 = vmatpush1.msra.mxu0 0.0
  %9509 = vmatprep.subr.mxu0 0.0
  %9510 = vmatpush1.msra.mxu0 0.0
  %9511 = vmatprep.subr.mxu0 0.0
  %9512 = vmatpush1.msra.mxu0 0.0
  %9513 = vmatprep.subr.mxu0 0.0
  %9514 = vmatpush1.msra.mxu0 0.0
  %9515 = vmatprep.subr.mxu0 0.0
  %9516 = vmatpush1.msra.mxu0 0.0
  %9517 = vmatprep.subr.mxu0 0.0
  %9518 = vmatpush1.msra.mxu0 0.0
  %9519 = vmatprep.subr.mxu0 0.0
  %9520 = vmatpush1.msra.mxu0 0.0
  %9521 = vmatprep.subr.mxu0 0.0
  %9522 = vmatpush1.msra.mxu0 0.0
  %9523 = vmatprep.subr.mxu0 0.0
  %9524 = vmatpush1.msra.mxu0 0.0
  %9525 = vmatprep.subr.mxu0 0.0
  %9526 = vmatpush1.msra.mxu0 0.0
  %9527 = vmatprep.subr.mxu0 0.0
  %9528 = vmatpush1.msra.mxu0 0.0
  %9529 = vmatprep.subr.mxu0 0.0
  %9530 = vmatpush1.msra.mxu0 0.0
  %9531 = vmatprep.subr.mxu0 0.0
  %9532 = vmatpush1.msra.mxu0 0.0
  %9533 = vmatprep.subr.mxu0 0.0
  %9534 = vmatpush1.msra.mxu0 0.0
  %9535 = vmatprep.subr.mxu0 0.0
  %9536 = vmatpush1.msra.mxu0 0.0
  %9537 = vmatprep.subr.mxu0 0.0
  %9538 = vmatpush1.msra.mxu0 0.0
  %9539 = vmatprep.subr.mxu0 0.0
  %9540 = vmatpush1.msra.mxu0 0.0
  %9541 = vmatprep.mubr.f32.mxu0 0.0
  %9542 = vmatmul.mubr.f32.gmra.mrb[0].mxu0 %v6930
  %v9543 = vpop.f32.mrb[0].mxu0
  %v9544 = vadd.f32 0.0, %v9543
  %v9545 = vpop.f32.mrb[0].mxu0
  %9546 = vmatprep.mubr.f32.mxu0 0.0
  %9547 = vmatmul.mubr.f32.gmra.mrb[0].mxu0 %v6933
  %v9548 = vpop.f32.mrb[0].mxu0
  %v9549 = vadd.f32 0.0, %v9548
  %v9550 = vpop.f32.mrb[0].mxu0
  %9551 = vmatprep.mubr.f32.mxu0 0.0
  %9552 = vmatmul.mubr.f32.gmra.mrb[0].mxu0 %v6936
  %v9553 = vpop.f32.mrb[0].mxu0
  %v9554 = vadd.f32 0.0, %v9553
  %v9555 = vpop.f32.mrb[0].mxu0
  %9556 = vmatprep.mubr.f32.mxu0 0.0
  %9557 = vmatmul.mubr.f32.gmra.mrb[0].mxu0 %v6939
  %v9558 = vpop.f32.mrb[0].mxu0
  %v9559 = vadd.f32 0.0, %v9558
  %v9560 = vpop.f32.mrb[0].mxu0
  %9561 = vmatprep.mubr.f32.mxu0 0.0
  %9562 = vmatmul.mubr.f32.gmra.mrb[0].mxu0 %v6942
  %v9563 = vpop.f32.mrb[0].mxu0
  %v9564 = vadd.f32 0.0, %v9563
  %v9565 = vpop.f32.mrb[0].mxu0
  %9566 = vmatprep.mubr.f32.mxu0 0.0
  %9567 = vmatmul.mubr.f32.gmra.mrb[0].mxu0 %v6945
  %v9568 = vpop.f32.mrb[0].mxu0
  %v9569 = vadd.f32 0.0, %v9568
  %v9570 = vpop.f32.mrb[0].mxu0
  %9571 = vmatprep.mubr.f32.mxu0 0.0
  %9572 = vmatmul.mubr.f32.gmra.mrb[0].mxu0 %v6948
  %v9573 = vpop.f32.mrb[0].mxu0
  %v9574 = vadd.f32 0.0, %v9573
  %v9575 = vpop.f32.mrb[0].mxu0
  %9576 = vmatprep.mubr.f32.mxu0 0.0
  %9577 = vmatmul.mubr.f32.gmra.mrb[0].mxu0 %v6951
  %v9578 = vpop.f32.mrb[0].mxu0
  %v9579 = vpop.f32.mrb[0].mxu0
  %9580 = vmatprep.mubr.f32.mxu0 0.0
  %9581 = vmatmul.mubr.f32.gmra.mrb[0].mxu0 %v6954
  %v9582 = vpop.f32.mrb[0].mxu0
  %v9583 = vadd.f32 0.0, %v9582
  %v9584 = vpop.f32.mrb[0].mxu0
  %9585 = vmatprep.mubr.f32.mxu0 0.0
  %9586 = vmatmul.mubr.f32.gmra.mrb[0].mxu0 %v6957
  %v9587 = vpop.f32.mrb[0].mxu0
  %v9588 = vadd.f32 0.0, %v9587
  %v9589 = vpop.f32.mrb[0].mxu0
  %9590 = vmatprep.mubr.f32.mxu0 0.0
  %9591 = vmatmul.mubr.f32.gmra.mrb[0].mxu0 %v6960
  %v9592 = vpop.f32.mrb[0].mxu0
  %v9593 = vadd.f32 0.0, %v9592
  %v9594 = vpop.f32.mrb[0].mxu0
  %9595 = vmatprep.mubr.f32.mxu0 0.0
  %9596 = vmatmul.mubr.f32.gmra.mrb[0].mxu0 %v6963
  %v9597 = vpop.f32.mrb[0].mxu0
  %v9598 = vadd.f32 0.0, %v9597
  %v9599 = vpop.f32.mrb[0].mxu0
  %9600 = vmatprep.mubr.f32.mxu0 0.0
  %9601 = vmatmul.mubr.f32.gmra.mrb[0].mxu0 %v6966
  %v9602 = vpop.f32.mrb[0].mxu0
  %v9603 = vadd.f32 0.0, %v9602
  %v9604 = vpop.f32.mrb[0].mxu0
  %9605 = vmatprep.mubr.f32.mxu0 0.0
  %9606 = vmatmul.mubr.f32.gmra.mrb[0].mxu0 %v6969
  %v9607 = vpop.f32.mrb[0].mxu0
  %v9608 = vadd.f32 0.0, %v9607
  %v9609 = vpop.f32.mrb[0].mxu0
  %9610 = vmatprep.mubr.f32.mxu0 0.0
  %9611 = vmatmul.mubr.f32.gmra.mrb[0].mxu0 %v6972
  %v9612 = vpop.f32.mrb[0].mxu0
  %v9613 = vadd.f32 0.0, %v9612
  %v9614 = vpop.f32.mrb[0].mxu0
  %9615 = vdwg.mxu0
  %v9616 = vadd.f32 %v9463, %v9544
  %v9617 = vadd.f32 %v9464, %v9549
  %v9618 = vadd.f32 %v9465, %v9554
  %v9619 = vadd.f32 %v9466, %v9559
  %v9620 = vadd.f32 %v9467, %v9564
  %v9621 = vadd.f32 %v9468, %v9569
  %v9622 = vadd.f32 %v9469, %v9574
  %v9623 = vadd.f32 %v9470, %v9583
  %v9624 = vadd.f32 %v9471, %v9588
  %v9625 = vadd.f32 %v9472, %v9593
  %v9626 = vadd.f32 %v9473, %v9598
  %v9627 = vadd.f32 %v9474, %v9603
  %v9628 = vadd.f32 %v9475, %v9608
  %v9629 = vadd.f32 %v9476, %v9613
  %9630 = vmatprep.subr.mxu0 0.0
  %9631 = vmatpush1.msra.mxu0 %v4926
  %9632 = vmatprep.subr.mxu0 0.0
  %9633 = vmatpush1.msra.mxu0 %v4927
  %9634 = vmatprep.subr.mxu0 0.0
  %9635 = vmatpush1.msra.mxu0 %v4928
  %9636 = vmatprep.subr.mxu0 0.0
  %9637 = vmatpush1.msra.mxu0 %v4929
  %9638 = vmatprep.subr.mxu0 0.0
  %9639 = vmatpush1.msra.mxu0 0.0
  %9640 = vmatprep.subr.mxu0 0.0
  %9641 = vmatpush1.msra.mxu0 0.0
  %9642 = vmatprep.subr.mxu0 0.0
  %9643 = vmatpush1.msra.mxu0 0.0
  %9644 = vmatprep.subr.mxu0 0.0
  %9645 = vmatpush1.msra.mxu0 0.0
  %9646 = vmatprep.subr.mxu0 0.0
  %9647 = vmatpush1.msra.mxu0 0.0
  %9648 = vmatprep.subr.mxu0 0.0
  %9649 = vmatpush1.msra.mxu0 0.0
  %9650 = vmatprep.subr.mxu0 0.0
  %9651 = vmatpush1.msra.mxu0 0.0
  %9652 = vmatprep.subr.mxu0 0.0
  %9653 = vmatpush1.msra.mxu0 0.0
  %9654 = vmatprep.subr.mxu0 0.0
  %9655 = vmatpush1.msra.mxu0 0.0
  %9656 = vmatprep.subr.mxu0 0.0
  %9657 = vmatpush1.msra.mxu0 0.0
  %9658 = vmatprep.subr.mxu0 0.0
  %9659 = vmatpush1.msra.mxu0 0.0
  %9660 = vmatprep.subr.mxu0 0.0
  %9661 = vmatpush1.msra.mxu0 0.0
  %9662 = vmatprep.subr.mxu0 0.0
  %9663 = vmatpush1.msra.mxu0 0.0
  %9664 = vmatprep.subr.mxu0 0.0
  %9665 = vmatpush1.msra.mxu0 0.0
  %9666 = vmatprep.subr.mxu0 0.0
  %9667 = vmatpush1.msra.mxu0 0.0
  %9668 = vmatprep.subr.mxu0 0.0
  %9669 = vmatpush1.msra.mxu0 0.0
  %9670 = vmatprep.subr.mxu0 0.0
  %9671 = vmatpush1.msra.mxu0 0.0
  %9672 = vmatprep.subr.mxu0 0.0
  %9673 = vmatpush1.msra.mxu0 0.0
  %9674 = vmatprep.subr.mxu0 0.0
  %9675 = vmatpush1.msra.mxu0 0.0
  %9676 = vmatprep.subr.mxu0 0.0
  %9677 = vmatpush1.msra.mxu0 0.0
  %9678 = vmatprep.subr.mxu0 0.0
  %9679 = vmatpush1.msra.mxu0 0.0
  %9680 = vmatprep.subr.mxu0 0.0
  %9681 = vmatpush1.msra.mxu0 0.0
  %9682 = vmatprep.subr.mxu0 0.0
  %9683 = vmatpush1.msra.mxu0 0.0
  %9684 = vmatprep.subr.mxu0 0.0
  %9685 = vmatpush1.msra.mxu0 0.0
  %9686 = vmatprep.subr.mxu0 0.0
  %9687 = vmatpush1.msra.mxu0 0.0
  %9688 = vmatprep.subr.mxu0 0.0
  %9689 = vmatpush1.msra.mxu0 0.0
  %9690 = vmatprep.subr.mxu0 0.0
  %9691 = vmatpush1.msra.mxu0 0.0
  %9692 = vmatprep.subr.mxu0 0.0
  %9693 = vmatpush1.msra.mxu0 0.0
  %9694 = vmatprep.mubr.f32.mxu0 0.0
  %9695 = vmatmul.mubr.f32.gmra.mrb[0].mxu0 %v8288
  %v9696 = vpop.f32.mrb[0].mxu0
  %v9697 = vadd.f32 0.0, %v9696
  %v9698 = vpop.f32.mrb[0].mxu0
  %9699 = vmatprep.mubr.f32.mxu0 0.0
  %9700 = vmatmul.mubr.f32.gmra.mrb[0].mxu0 %v8291
  %v9701 = vpop.f32.mrb[0].mxu0
  %v9702 = vadd.f32 0.0, %v9701
  %v9703 = vpop.f32.mrb[0].mxu0
  %9704 = vmatprep.mubr.f32.mxu0 0.0
  %9705 = vmatmul.mubr.f32.gmra.mrb[0].mxu0 %v8294
  %v9706 = vpop.f32.mrb[0].mxu0
  %v9707 = vadd.f32 0.0, %v9706
  %v9708 = vpop.f32.mrb[0].mxu0
  %9709 = vmatprep.mubr.f32.mxu0 0.0
  %9710 = vmatmul.mubr.f32.gmra.mrb[0].mxu0 %v8297
  %v9711 = vpop.f32.mrb[0].mxu0
  %v9712 = vadd.f32 0.0, %v9711
  %v9713 = vpop.f32.mrb[0].mxu0
  %9714 = vmatprep.mubr.f32.mxu0 0.0
  %9715 = vmatmul.mubr.f32.gmra.mrb[0].mxu0 %v8300
  %v9716 = vpop.f32.mrb[0].mxu0
  %v9717 = vadd.f32 0.0, %v9716
  %v9718 = vpop.f32.mrb[0].mxu0
  %9719 = vmatprep.mubr.f32.mxu0 0.0
  %9720 = vmatmul.mubr.f32.gmra.mrb[0].mxu0 %v8303
  %v9721 = vpop.f32.mrb[0].mxu0
  %v9722 = vadd.f32 0.0, %v9721
  %v9723 = vpop.f32.mrb[0].mxu0
  %9724 = vmatprep.mubr.f32.mxu0 0.0
  %9725 = vmatmul.mubr.f32.gmra.mrb[0].mxu0 %v8306
  %v9726 = vpop.f32.mrb[0].mxu0
  %v9727 = vadd.f32 0.0, %v9726
  %v9728 = vpop.f32.mrb[0].mxu0
  %9729 = vmatprep.mubr.f32.mxu0 0.0
  %9730 = vmatmul.mubr.f32.gmra.mrb[0].mxu0 %v8309
  %v9731 = vpop.f32.mrb[0].mxu0
  %v9732 = vpop.f32.mrb[0].mxu0
  %9733 = vmatprep.mubr.f32.mxu0 0.0
  %9734 = vmatmul.mubr.f32.gmra.mrb[0].mxu0 %v8312
  %v9735 = vpop.f32.mrb[0].mxu0
  %v9736 = vadd.f32 0.0, %v9735
  %v9737 = vpop.f32.mrb[0].mxu0
  %9738 = vmatprep.mubr.f32.mxu0 0.0
  %9739 = vmatmul.mubr.f32.gmra.mrb[0].mxu0 %v8315
  %v9740 = vpop.f32.mrb[0].mxu0
  %v9741 = vadd.f32 0.0, %v9740
  %v9742 = vpop.f32.mrb[0].mxu0
  %9743 = vmatprep.mubr.f32.mxu0 0.0
  %9744 = vmatmul.mubr.f32.gmra.mrb[0].mxu0 %v8318
  %v9745 = vpop.f32.mrb[0].mxu0
  %v9746 = vadd.f32 0.0, %v9745
  %v9747 = vpop.f32.mrb[0].mxu0
  %9748 = vmatprep.mubr.f32.mxu0 0.0
  %9749 = vmatmul.mubr.f32.gmra.mrb[0].mxu0 %v8321
  %v9750 = vpop.f32.mrb[0].mxu0
  %v9751 = vadd.f32 0.0, %v9750
  %v9752 = vpop.f32.mrb[0].mxu0
  %9753 = vmatprep.mubr.f32.mxu0 0.0
  %9754 = vmatmul.mubr.f32.gmra.mrb[0].mxu0 %v8324
  %v9755 = vpop.f32.mrb[0].mxu0
  %v9756 = vadd.f32 0.0, %v9755
  %v9757 = vpop.f32.mrb[0].mxu0
  %9758 = vmatprep.mubr.f32.mxu0 0.0
  %9759 = vmatmul.mubr.f32.gmra.mrb[0].mxu0 %v8327
  %v9760 = vpop.f32.mrb[0].mxu0
  %v9761 = vadd.f32 0.0, %v9760
  %v9762 = vpop.f32.mrb[0].mxu0
  %9763 = vmatprep.mubr.f32.mxu0 0.0
  %9764 = vmatmul.mubr.f32.gmra.mrb[0].mxu0 %v8330
  %v9765 = vpop.f32.mrb[0].mxu0
  %v9766 = vadd.f32 0.0, %v9765
  %v9767 = vpop.f32.mrb[0].mxu0
  %9768 = vdwg.mxu0
  %v9769 = vadd.f32 %v9616, %v9697
  %v9770 = vadd.f32 %v9617, %v9702
  %v9771 = vadd.f32 %v9618, %v9707
  %v9772 = vadd.f32 %v9619, %v9712
  %v9773 = vadd.f32 %v9620, %v9717
  %v9774 = vadd.f32 %v9621, %v9722
  %v9775 = vadd.f32 %v9622, %v9727
  %v9776 = vadd.f32 %v9623, %v9736
  %v9777 = vadd.f32 %v9624, %v9741
  %v9778 = vadd.f32 %v9625, %v9746
  %v9779 = vadd.f32 %v9626, %v9751
  %v9780 = vadd.f32 %v9627, %v9756
  %v9781 = vadd.f32 %v9628, %v9761
  %v9782 = vadd.f32 %v9629, %v9766
  %9783 = vmatprep.subr.mxu0 0.0
  %9784 = vmatpush1.msra.mxu0 %v5144
  %9785 = vmatprep.subr.mxu0 0.0
  %9786 = vmatpush1.msra.mxu0 %v5145
  %9787 = vmatprep.subr.mxu0 0.0
  %9788 = vmatpush1.msra.mxu0 %v5146
  %9789 = vmatprep.subr.mxu0 0.0
  %9790 = vmatpush1.msra.mxu0 %v5147
  %9791 = vmatprep.subr.mxu0 0.0
  %9792 = vmatpush1.msra.mxu0 0.0
  %9793 = vmatprep.subr.mxu0 0.0
  %9794 = vmatpush1.msra.mxu0 0.0
  %9795 = vmatprep.subr.mxu0 0.0
  %9796 = vmatpush1.msra.mxu0 0.0
  %9797 = vmatprep.subr.mxu0 0.0
  %9798 = vmatpush1.msra.mxu0 0.0
  %9799 = vmatprep.subr.mxu0 0.0
  %9800 = vmatpush1.msra.mxu0 0.0
  %9801 = vmatprep.subr.mxu0 0.0
  %9802 = vmatpush1.msra.mxu0 0.0
  %9803 = vmatprep.subr.mxu0 0.0
  %9804 = vmatpush1.msra.mxu0 0.0
  %9805 = vmatprep.subr.mxu0 0.0
  %9806 = vmatpush1.msra.mxu0 0.0
  %9807 = vmatprep.subr.mxu0 0.0
  %9808 = vmatpush1.msra.mxu0 0.0
  %9809 = vmatprep.subr.mxu0 0.0
  %9810 = vmatpush1.msra.mxu0 0.0
  %9811 = vmatprep.subr.mxu0 0.0
  %9812 = vmatpush1.msra.mxu0 0.0
  %9813 = vmatprep.subr.mxu0 0.0
  %9814 = vmatpush1.msra.mxu0 0.0
  %9815 = vmatprep.subr.mxu0 0.0
  %9816 = vmatpush1.msra.mxu0 0.0
  %9817 = vmatprep.subr.mxu0 0.0
  %9818 = vmatpush1.msra.mxu0 0.0
  %9819 = vmatprep.subr.mxu0 0.0
  %9820 = vmatpush1.msra.mxu0 0.0
  %9821 = vmatprep.subr.mxu0 0.0
  %9822 = vmatpush1.msra.mxu0 0.0
  %9823 = vmatprep.subr.mxu0 0.0
  %9824 = vmatpush1.msra.mxu0 0.0
  %9825 = vmatprep.subr.mxu0 0.0
  %9826 = vmatpush1.msra.mxu0 0.0
  %9827 = vmatprep.subr.mxu0 0.0
  %9828 = vmatpush1.msra.mxu0 0.0
  %9829 = vmatprep.subr.mxu0 0.0
  %9830 = vmatpush1.msra.mxu0 0.0
  %9831 = vmatprep.subr.mxu0 0.0
  %9832 = vmatpush1.msra.mxu0 0.0
  %9833 = vmatprep.subr.mxu0 0.0
  %9834 = vmatpush1.msra.mxu0 0.0
  %9835 = vmatprep.subr.mxu0 0.0
  %9836 = vmatpush1.msra.mxu0 0.0
  %9837 = vmatprep.subr.mxu0 0.0
  %9838 = vmatpush1.msra.mxu0 0.0
  %9839 = vmatprep.subr.mxu0 0.0
  %9840 = vmatpush1.msra.mxu0 0.0
  %9841 = vmatprep.subr.mxu0 0.0
  %9842 = vmatpush1.msra.mxu0 0.0
  %9843 = vmatprep.subr.mxu0 0.0
  %9844 = vmatpush1.msra.mxu0 0.0
  %9845 = vmatprep.subr.mxu0 0.0
  %9846 = vmatpush1.msra.mxu0 0.0
  %9847 = vmatprep.mubr.f32.mxu0 0.0
  %9848 = vmatmul.mubr.f32.gmra.mrb[0].mxu0 %v8501
  %v9849 = vpop.f32.mrb[0].mxu0
  %v9850 = vadd.f32 0.0, %v9849
  %v9851 = vpop.f32.mrb[0].mxu0
  %9852 = vmatprep.mubr.f32.mxu0 0.0
  %9853 = vmatmul.mubr.f32.gmra.mrb[0].mxu0 %v8504
  %v9854 = vpop.f32.mrb[0].mxu0
  %v9855 = vadd.f32 0.0, %v9854
  %v9856 = vpop.f32.mrb[0].mxu0
  %9857 = vmatprep.mubr.f32.mxu0 0.0
  %9858 = vmatmul.mubr.f32.gmra.mrb[0].mxu0 %v8507
  %v9859 = vpop.f32.mrb[0].mxu0
  %v9860 = vadd.f32 0.0, %v9859
  %v9861 = vpop.f32.mrb[0].mxu0
  %9862 = vmatprep.mubr.f32.mxu0 0.0
  %9863 = vmatmul.mubr.f32.gmra.mrb[0].mxu0 %v8510
  %v9864 = vpop.f32.mrb[0].mxu0
  %v9865 = vadd.f32 0.0, %v9864
  %v9866 = vpop.f32.mrb[0].mxu0
  %9867 = vmatprep.mubr.f32.mxu0 0.0
  %9868 = vmatmul.mubr.f32.gmra.mrb[0].mxu0 %v8513
  %v9869 = vpop.f32.mrb[0].mxu0
  %v9870 = vadd.f32 0.0, %v9869
  %v9871 = vpop.f32.mrb[0].mxu0
  %9872 = vmatprep.mubr.f32.mxu0 0.0
  %9873 = vmatmul.mubr.f32.gmra.mrb[0].mxu0 %v8516
  %v9874 = vpop.f32.mrb[0].mxu0
  %v9875 = vadd.f32 0.0, %v9874
  %v9876 = vpop.f32.mrb[0].mxu0
  %9877 = vmatprep.mubr.f32.mxu0 0.0
  %9878 = vmatmul.mubr.f32.gmra.mrb[0].mxu0 %v8519
  %v9879 = vpop.f32.mrb[0].mxu0
  %v9880 = vadd.f32 0.0, %v9879
  %v9881 = vpop.f32.mrb[0].mxu0
  %9882 = vmatprep.mubr.f32.mxu0 0.0
  %9883 = vmatmul.mubr.f32.gmra.mrb[0].mxu0 %v8522
  %v9884 = vpop.f32.mrb[0].mxu0
  %v9885 = vpop.f32.mrb[0].mxu0
  %9886 = vmatprep.mubr.f32.mxu0 0.0
  %9887 = vmatmul.mubr.f32.gmra.mrb[0].mxu0 %v8525
  %v9888 = vpop.f32.mrb[0].mxu0
  %v9889 = vadd.f32 0.0, %v9888
  %v9890 = vpop.f32.mrb[0].mxu0
  %9891 = vmatprep.mubr.f32.mxu0 0.0
  %9892 = vmatmul.mubr.f32.gmra.mrb[0].mxu0 %v8528
  %v9893 = vpop.f32.mrb[0].mxu0
  %v9894 = vadd.f32 0.0, %v9893
  %v9895 = vpop.f32.mrb[0].mxu0
  %9896 = vmatprep.mubr.f32.mxu0 0.0
  %9897 = vmatmul.mubr.f32.gmra.mrb[0].mxu0 %v8531
  %v9898 = vpop.f32.mrb[0].mxu0
  %v9899 = vadd.f32 0.0, %v9898
  %v9900 = vpop.f32.mrb[0].mxu0
  %9901 = vmatprep.mubr.f32.mxu0 0.0
  %9902 = vmatmul.mubr.f32.gmra.mrb[0].mxu0 %v8534
  %v9903 = vpop.f32.mrb[0].mxu0
  %v9904 = vadd.f32 0.0, %v9903
  %v9905 = vpop.f32.mrb[0].mxu0
  %9906 = vmatprep.mubr.f32.mxu0 0.0
  %9907 = vmatmul.mubr.f32.gmra.mrb[0].mxu0 %v8537
  %v9908 = vpop.f32.mrb[0].mxu0
  %v9909 = vadd.f32 0.0, %v9908
  %v9910 = vpop.f32.mrb[0].mxu0
  %9911 = vmatprep.mubr.f32.mxu0 0.0
  %9912 = vmatmul.mubr.f32.gmra.mrb[0].mxu0 %v8540
  %v9913 = vpop.f32.mrb[0].mxu0
  %v9914 = vadd.f32 0.0, %v9913
  %v9915 = vpop.f32.mrb[0].mxu0
  %9916 = vmatprep.mubr.f32.mxu0 0.0
  %9917 = vmatmul.mubr.f32.gmra.mrb[0].mxu0 %v8543
  %v9918 = vpop.f32.mrb[0].mxu0
  %v9919 = vadd.f32 0.0, %v9918
  %v9920 = vpop.f32.mrb[0].mxu0
  %9921 = vdwg.mxu0
  %v9922 = vadd.f32 %v9769, %v9850
  %v9923 = vadd.f32 %v9770, %v9855
  %v9924 = vadd.f32 %v9771, %v9860
  %v9925 = vadd.f32 %v9772, %v9865
  %v9926 = vadd.f32 %v9773, %v9870
  %v9927 = vadd.f32 %v9774, %v9875
  %v9928 = vadd.f32 %v9775, %v9880
  %v9929 = vadd.f32 %v9776, %v9889
  %v9930 = vadd.f32 %v9777, %v9894
  %v9931 = vadd.f32 %v9778, %v9899
  %v9932 = vadd.f32 %v9779, %v9904
  %v9933 = vadd.f32 %v9780, %v9909
  %v9934 = vadd.f32 %v9781, %v9914
  %v9935 = vadd.f32 %v9782, %v9919
  %v9936 = vld [vmem:[#allocation2 + $0x189] sm:$0xff]
  %v9937 = vld [vmem:[#allocation2 + $0x191] sm:$0xff]
  %v9938 = vld [vmem:[#allocation2 + $0x199] sm:$0xff]
  %v9939 = vld [vmem:[#allocation2 + $0x1a1] sm:$0xff]
  %v9940 = vld [vmem:[#allocation2 + $0x1a9] sm:$0xff]
  %v9941 = vld [vmem:[#allocation2 + $0x1b1] sm:$0xff]
  %v9942 = vld [vmem:[#allocation2 + $0x1b9] sm:$0xff]
  %v9943 = vld [vmem:[#allocation2 + $0x1c1] sm:$0xff]
  %v9944 = vld [vmem:[#allocation2 + $0x1c9] sm:$0xff]
  %v9945 = vld [vmem:[#allocation2 + $0x1d1] sm:$0xff]
  %v9946 = vld [vmem:[#allocation2 + $0x1d9] sm:$0xff]
  %v9947 = vld [vmem:[#allocation2 + $0x1e1] sm:$0xff]
  %v9948 = vld [vmem:[#allocation2 + $0x1e9] sm:$0xff]
  %v9949 = vld [vmem:[#allocation2 + $0x1f1] sm:$0xff]
  %v9950 = vld [vmem:[#allocation2 + $0x1f9] sm:$0xff]
  %v9952 = vsel %vm3500, %v9936, 0
  %v9955 = vsel %vm3500, %v9937, 0
  %v9958 = vsel %vm3500, %v9938, 0
  %v9961 = vsel %vm3500, %v9939, 0
  %v9964 = vsel %vm3500, %v9940, 0
  %v9967 = vsel %vm3500, %v9941, 0
  %v9970 = vsel %vm3500, %v9942, 0
  %v9973 = vsel %vm3500, %v9943, 0
  %v9976 = vsel %vm3500, %v9944, 0
  %v9979 = vsel %vm3500, %v9945, 0
  %v9982 = vsel %vm3500, %v9946, 0
  %v9985 = vsel %vm3500, %v9947, 0
  %v9988 = vsel %vm3500, %v9948, 0
  %v9991 = vsel %vm3500, %v9949, 0
  %v9994 = vsel %vm3500, %v9950, 0
  %9996 = vmatprep.subr.mxu0 0.0
  %9997 = vmatpush1.msra.mxu0 %v5362
  %9998 = vmatprep.subr.mxu0 0.0
  %9999 = vmatpush1.msra.mxu0 %v5363
  %10000 = vmatprep.subr.mxu0 0.0
  %10001 = vmatpush1.msra.mxu0 %v5364
  %10002 = vmatprep.subr.mxu0 0.0
  %10003 = vmatpush1.msra.mxu0 %v5365
  %10004 = vmatprep.subr.mxu0 0.0
  %10005 = vmatpush1.msra.mxu0 0.0
  %10006 = vmatprep.subr.mxu0 0.0
  %10007 = vmatpush1.msra.mxu0 0.0
  %10008 = vmatprep.subr.mxu0 0.0
  %10009 = vmatpush1.msra.mxu0 0.0
  %10010 = vmatprep.subr.mxu0 0.0
  %10011 = vmatpush1.msra.mxu0 0.0
  %10012 = vmatprep.subr.mxu0 0.0
  %10013 = vmatpush1.msra.mxu0 0.0
  %10014 = vmatprep.subr.mxu0 0.0
  %10015 = vmatpush1.msra.mxu0 0.0
  %10016 = vmatprep.subr.mxu0 0.0
  %10017 = vmatpush1.msra.mxu0 0.0
  %10018 = vmatprep.subr.mxu0 0.0
  %10019 = vmatpush1.msra.mxu0 0.0
  %10020 = vmatprep.subr.mxu0 0.0
  %10021 = vmatpush1.msra.mxu0 0.0
  %10022 = vmatprep.subr.mxu0 0.0
  %10023 = vmatpush1.msra.mxu0 0.0
  %10024 = vmatprep.subr.mxu0 0.0
  %10025 = vmatpush1.msra.mxu0 0.0
  %10026 = vmatprep.subr.mxu0 0.0
  %10027 = vmatpush1.msra.mxu0 0.0
  %10028 = vmatprep.subr.mxu0 0.0
  %10029 = vmatpush1.msra.mxu0 0.0
  %10030 = vmatprep.subr.mxu0 0.0
  %10031 = vmatpush1.msra.mxu0 0.0
  %10032 = vmatprep.subr.mxu0 0.0
  %10033 = vmatpush1.msra.mxu0 0.0
  %10034 = vmatprep.subr.mxu0 0.0
  %10035 = vmatpush1.msra.mxu0 0.0
  %10036 = vmatprep.subr.mxu0 0.0
  %10037 = vmatpush1.msra.mxu0 0.0
  %10038 = vmatprep.subr.mxu0 0.0
  %10039 = vmatpush1.msra.mxu0 0.0
  %10040 = vmatprep.subr.mxu0 0.0
  %10041 = vmatpush1.msra.mxu0 0.0
  %10042 = vmatprep.subr.mxu0 0.0
  %10043 = vmatpush1.msra.mxu0 0.0
  %10044 = vmatprep.subr.mxu0 0.0
  %10045 = vmatpush1.msra.mxu0 0.0
  %10046 = vmatprep.subr.mxu0 0.0
  %10047 = vmatpush1.msra.mxu0 0.0
  %10048 = vmatprep.subr.mxu0 0.0
  %10049 = vmatpush1.msra.mxu0 0.0
  %10050 = vmatprep.subr.mxu0 0.0
  %10051 = vmatpush1.msra.mxu0 0.0
  %10052 = vmatprep.subr.mxu0 0.0
  %10053 = vmatpush1.msra.mxu0 0.0
  %10054 = vmatprep.subr.mxu0 0.0
  %10055 = vmatpush1.msra.mxu0 0.0
  %10056 = vmatprep.subr.mxu0 0.0
  %10057 = vmatpush1.msra.mxu0 0.0
  %10058 = vmatprep.subr.mxu0 0.0
  %10059 = vmatpush1.msra.mxu0 0.0
  %10060 = vmatprep.mubr.f32.mxu0 0.0
  %10061 = vmatmul.mubr.f32.gmra.mrb[0].mxu0 %v9952
  %v10062 = vpop.f32.mrb[0].mxu0
  %v10063 = vadd.f32 0.0, %v10062
  %v10064 = vpop.f32.mrb[0].mxu0
  %10065 = vmatprep.mubr.f32.mxu0 0.0
  %10066 = vmatmul.mubr.f32.gmra.mrb[0].mxu0 %v9955
  %v10067 = vpop.f32.mrb[0].mxu0
  %v10068 = vadd.f32 0.0, %v10067
  %v10069 = vpop.f32.mrb[0].mxu0
  %10070 = vmatprep.mubr.f32.mxu0 0.0
  %10071 = vmatmul.mubr.f32.gmra.mrb[0].mxu0 %v9958
  %v10072 = vpop.f32.mrb[0].mxu0
  %v10073 = vadd.f32 0.0, %v10072
  %v10074 = vpop.f32.mrb[0].mxu0
  %10075 = vmatprep.mubr.f32.mxu0 0.0
  %10076 = vmatmul.mubr.f32.gmra.mrb[0].mxu0 %v9961
  %v10077 = vpop.f32.mrb[0].mxu0
  %v10078 = vadd.f32 0.0, %v10077
  %v10079 = vpop.f32.mrb[0].mxu0
  %10080 = vmatprep.mubr.f32.mxu0 0.0
  %10081 = vmatmul.mubr.f32.gmra.mrb[0].mxu0 %v9964
  %v10082 = vpop.f32.mrb[0].mxu0
  %v10083 = vadd.f32 0.0, %v10082
  %v10084 = vpop.f32.mrb[0].mxu0
  %10085 = vmatprep.mubr.f32.mxu0 0.0
  %10086 = vmatmul.mubr.f32.gmra.mrb[0].mxu0 %v9967
  %v10087 = vpop.f32.mrb[0].mxu0
  %v10088 = vadd.f32 0.0, %v10087
  %v10089 = vpop.f32.mrb[0].mxu0
  %10090 = vmatprep.mubr.f32.mxu0 0.0
  %10091 = vmatmul.mubr.f32.gmra.mrb[0].mxu0 %v9970
  %v10092 = vpop.f32.mrb[0].mxu0
  %v10093 = vadd.f32 0.0, %v10092
  %v10094 = vpop.f32.mrb[0].mxu0
  %10095 = vmatprep.mubr.f32.mxu0 0.0
  %10096 = vmatmul.mubr.f32.gmra.mrb[0].mxu0 %v9973
  %v10097 = vpop.f32.mrb[0].mxu0
  %v10098 = vpop.f32.mrb[0].mxu0
  %10099 = vmatprep.mubr.f32.mxu0 0.0
  %10100 = vmatmul.mubr.f32.gmra.mrb[0].mxu0 %v9976
  %v10101 = vpop.f32.mrb[0].mxu0
  %v10102 = vadd.f32 0.0, %v10101
  %v10103 = vpop.f32.mrb[0].mxu0
  %10104 = vmatprep.mubr.f32.mxu0 0.0
  %10105 = vmatmul.mubr.f32.gmra.mrb[0].mxu0 %v9979
  %v10106 = vpop.f32.mrb[0].mxu0
  %v10107 = vadd.f32 0.0, %v10106
  %v10108 = vpop.f32.mrb[0].mxu0
  %10109 = vmatprep.mubr.f32.mxu0 0.0
  %10110 = vmatmul.mubr.f32.gmra.mrb[0].mxu0 %v9982
  %v10111 = vpop.f32.mrb[0].mxu0
  %v10112 = vadd.f32 0.0, %v10111
  %v10113 = vpop.f32.mrb[0].mxu0
  %10114 = vmatprep.mubr.f32.mxu0 0.0
  %10115 = vmatmul.mubr.f32.gmra.mrb[0].mxu0 %v9985
  %v10116 = vpop.f32.mrb[0].mxu0
  %v10117 = vadd.f32 0.0, %v10116
  %v10118 = vpop.f32.mrb[0].mxu0
  %10119 = vmatprep.mubr.f32.mxu0 0.0
  %10120 = vmatmul.mubr.f32.gmra.mrb[0].mxu0 %v9988
  %v10121 = vpop.f32.mrb[0].mxu0
  %v10122 = vadd.f32 0.0, %v10121
  %v10123 = vpop.f32.mrb[0].mxu0
  %10124 = vmatprep.mubr.f32.mxu0 0.0
  %10125 = vmatmul.mubr.f32.gmra.mrb[0].mxu0 %v9991
  %v10126 = vpop.f32.mrb[0].mxu0
  %v10127 = vadd.f32 0.0, %v10126
  %v10128 = vpop.f32.mrb[0].mxu0
  %10129 = vmatprep.mubr.f32.mxu0 0.0
  %10130 = vmatmul.mubr.f32.gmra.mrb[0].mxu0 %v9994
  %v10131 = vpop.f32.mrb[0].mxu0
  %v10132 = vadd.f32 0.0, %v10131
  %v10133 = vpop.f32.mrb[0].mxu0
  %10134 = vdwg.mxu0
  %v10135 = vadd.f32 %v9922, %v10063
  %v10136 = vadd.f32 %v9923, %v10068
  %v10137 = vadd.f32 %v9924, %v10073
  %v10138 = vadd.f32 %v9925, %v10078
  %v10139 = vadd.f32 %v9926, %v10083
  %v10140 = vadd.f32 %v9927, %v10088
  %v10141 = vadd.f32 %v9928, %v10093
  %v10142 = vadd.f32 %v9929, %v10102
  %v10143 = vadd.f32 %v9930, %v10107
  %v10144 = vadd.f32 %v9931, %v10112
  %v10145 = vadd.f32 %v9932, %v10117
  %v10146 = vadd.f32 %v9933, %v10122
  %v10147 = vadd.f32 %v9934, %v10127
  %v10148 = vadd.f32 %v9935, %v10132
  %v10149 = vadd.f32 %v10135, %v5568
  %v10150 = vadd.f32 %v10136, %v5568
  %v10151 = vadd.f32 %v10137, %v5568
  %v10152 = vadd.f32 %v10138, %v5568
  %v10153 = vadd.f32 %v10139, %v5568
  %v10154 = vadd.f32 %v10140, %v5568
  %v10155 = vadd.f32 %v10141, %v5568
  %v10156 = vadd.f32 %v10142, %v5568
  %v10157 = vadd.f32 %v10143, %v5568
  %v10158 = vadd.f32 %v10144, %v5568
  %v10159 = vadd.f32 %v10145, %v5568
  %v10160 = vadd.f32 %v10146, %v5568
  %v10161 = vadd.f32 %v10147, %v5568
  %v10162 = vadd.f32 %v10148, %v5568
  %v10163 = vmax.f32 %v10149, 0.0
  %v10164 = vmax.f32 %v10150, 0.0
  %v10165 = vmax.f32 %v10151, 0.0
  %v10166 = vmax.f32 %v10152, 0.0
  %v10167 = vmax.f32 %v10153, 0.0
  %v10168 = vmax.f32 %v10154, 0.0
  %v10169 = vmax.f32 %v10155, 0.0
  %v10170 = vmax.f32 %v10156, 0.0
  %v10171 = vmax.f32 %v10157, 0.0
  %v10172 = vmax.f32 %v10158, 0.0
  %v10173 = vmax.f32 %v10159, 0.0
  %v10174 = vmax.f32 %v10160, 0.0
  %v10175 = vmax.f32 %v10161, 0.0
  %v10176 = vmax.f32 %v10162, 0.0
  %v10177 = vmax.f32 %v8726, %v10163
  %v10178 = vmax.f32 %v8727, %v10164
  %v10179 = vmax.f32 %v8728, %v10165
  %v10180 = vmax.f32 %v8729, %v10166
  %v10181 = vmax.f32 %v8730, %v10167
  %v10182 = vmax.f32 %v8731, %v10168
  %v10183 = vmax.f32 %v8732, %v10169
  %v10184 = vmax.f32 %v8733, %v10170
  %v10185 = vmax.f32 %v8734, %v10171
  %v10186 = vmax.f32 %v8735, %v10172
  %v10187 = vmax.f32 %v8736, %v10173
  %v10188 = vmax.f32 %v8737, %v10174
  %v10189 = vmax.f32 %v8738, %v10175
  %v10190 = vmax.f32 %v8739, %v10176
  %10191 = vst.msk [vmem:[%s6] sm:$0xff] %vm3500, %v10177
  %10192 = vst.msk [vmem:[%s6 + $0x8] sm:$0xff] %vm3500, %v10178
  %10193 = vst.msk [vmem:[%s6 + $0x10] sm:$0xff] %vm3500, %v10179
  %10194 = vst.msk [vmem:[%s6 + $0x18] sm:$0xff] %vm3500, %v10180
  %10195 = vst.msk [vmem:[%s6 + $0x20] sm:$0xff] %vm3500, %v10181
  %10196 = vst.msk [vmem:[%s6 + $0x28] sm:$0xff] %vm3500, %v10182
  %10197 = vst.msk [vmem:[%s6 + $0x30] sm:$0xff] %vm3500, %v10183
  %s10198 = scalar_lea.vmem %s6, 56
  %10199 = vst.msk [vmem:[%s10198] sm:$0xff] %vm3500, %v10184
  %10200 = vst.msk [vmem:[%s10198 + $0x8] sm:$0xff] %vm3500, %v10185
  %10201 = vst.msk [vmem:[%s10198 + $0x10] sm:$0xff] %vm3500, %v10186
  %10202 = vst.msk [vmem:[%s10198 + $0x18] sm:$0xff] %vm3500, %v10187
  %10203 = vst.msk [vmem:[%s10198 + $0x20] sm:$0xff] %vm3500, %v10188
  %10204 = vst.msk [vmem:[%s10198 + $0x28] sm:$0xff] %vm3500, %v10189
  %10205 = vst.msk [vmem:[%s10198 + $0x30] sm:$0xff] %vm3500, %v10190
  // Predicated region
  $region26: #{cnn_forward.2} parent=0 // pred_check
    _
  $region27: #{cnn_forward.2} parent=0 // pred_check_branch
    %10207 = sbr.rel (0) target = $region29
  $region28: #{cnn_forward.2} parent=0 // pred_region
    _
  $region29: #{cnn_forward.2} parent=0 // pred_fallthru
    _
  // Predicated region
  $region30: #{cnn_forward.2} parent=0 // pred_check
    _
  $region31: #{cnn_forward.2} parent=0 // pred_check_branch
    %10209 = sbr.rel (0) target = $region33
  $region32: #{cnn_forward.2} parent=0 // pred_region
    _
  $region33: #{cnn_forward.2} parent=0 // pred_fallthru
    _

// kernel: cnn_forward.3
$region0: #{cnn_forward.3}
  #allocation0 [shape = 'u32[]', space=smem, size = 0x4, offset = 0x4, fixed_abs, tag = 'smem constant byte address 0x4 - core index']
  #allocation1 [shape = 'u32[144,128]{1,0:T(1,128)}', space=vmem, size = 0x12000, scoped, tag = 'internal scratch']
  %s0 = inlined_call_operand.vmem [shape: f32[2,1792], index: 0, kind: input, shape index: {}]
  %s1 = inlined_call_operand.vmem [shape: f32[1792,500], index: 1, kind: input, shape index: {}]
  %s2 = inlined_call_operand.vmem [shape: f32[1,500], index: 2, kind: input, shape index: {}]
  %s3 = inlined_call_operand.vmem [shape: f32[500,10], index: 3, kind: input, shape index: {}]
  %s4 = inlined_call_operand.vmem [shape: f32[1,10], index: 4, kind: input, shape index: {}]
  %s5 = inlined_call_operand.hbm [shape: f32[2,10], index: 5, kind: output, shape index: {}]
  %s6 = sld [smem:[#allocation0]]
  $region30: #{cnn_forward.3} parent=0
    _
  %s8 = ssub.s32 1, %s6
  %s9 = scalar_select 0, %s8, %s6
  $region1: #{cnn_forward.3} parent=0
    #allocation2 [shape = 'u8[1024]{0}', space=vmem, size = 0x400, scoped, tag = 'output window, operand 0, single buffered']
    #allocation3 [shape = 's32[1]{0}', space=sflag, size = 0x4, scoped, tag = 'scoped memory for cnn_forward.3']
    %10 = vsyncpa [#allocation3], 0
    // Predicated region
    $region2: #{cnn_forward.3} parent=1 // pred_check
      _
    $region3: #{cnn_forward.3} parent=1 // pred_check_branch
      %12 = sbr.rel (0) target = $region5
    $region4: #{cnn_forward.3} parent=1 // pred_region
      _
    $region5: #{cnn_forward.3} parent=1 // pred_fallthru
      _
    // Predicated region
    $region6: #{cnn_forward.3} parent=1 // pred_check
      _
    $region7: #{cnn_forward.3} parent=1 // pred_check_branch
      %14 = sbr.rel (0) target = $region9
    $region8: #{cnn_forward.3} parent=1 // pred_region
      _
    $region9: #{cnn_forward.3} parent=1 // pred_fallthru
      _
    // Predicated region
    $region10: #{cnn_forward.3} parent=1 // pred_check
      _
    $region11: #{cnn_forward.3} parent=1 // pred_check_branch
      %16 = sbr.rel (0) target = $region13
    $region12: #{cnn_forward.3} parent=1 // pred_region
      _
    $region13: #{cnn_forward.3} parent=1 // pred_fallthru
      _
    // Predicated region
    $region14: #{cnn_forward.3} parent=1 // pred_check
      _
    $region15: #{cnn_forward.3} parent=1 // pred_check_branch
      %18 = sbr.rel (0) target = $region17
    $region16: #{cnn_forward.3} parent=1 // pred_region
      _
    $region17: #{cnn_forward.3} parent=1 // pred_fallthru
      _
    // Predicated region
    $region18: #{cnn_forward.3} parent=1 // pred_check
      _
    $region19: #{cnn_forward.3} parent=1 // pred_check_branch
      %20 = sbr.rel (0) target = $region21
    $region20: #{cnn_forward.3} parent=1 // pred_region
      _
    $region21: #{cnn_forward.3} parent=1 // pred_fallthru
      _
    %v21 = vld [vmem:[%s0] sm:$0xff]
    %v22 = vld [vmem:[%s0 + $0x8] sm:$0xff]
    %v23 = vld [vmem:[%s0 + $0x10] sm:$0xff]
    %v24 = vld [vmem:[%s0 + $0x18] sm:$0xf]
    %v25 = vld [vmem:[%s1] sm:$0xff]
    %v26 = vld [vmem:[%s1 + $0x8] sm:$0xff]
    %v27 = vld [vmem:[%s1 + $0x10] sm:$0xff]
    %v28 = vld [vmem:[%s1 + $0x18] sm:$0xff]
    %v29 = vld [vmem:[%s1 + $0x20] sm:$0xff]
    %v30 = vld [vmem:[%s1 + $0x28] sm:$0xff]
    %v31 = vld [vmem:[%s1 + $0x30] sm:$0xff]
    %v32 = vld [vmem:[%s1 + $0x38] sm:$0xff]
    %v33 = vld [vmem:[%s1 + $0x40] sm:$0xff]
    %v34 = vld [vmem:[%s1 + $0x48] sm:$0xff]
    %v35 = vld [vmem:[%s1 + $0x50] sm:$0xff]
    %v36 = vld [vmem:[%s1 + $0x58] sm:$0xff]
    %v37 = vld [vmem:[%s1 + $0x60] sm:$0xff]
    %v38 = vld [vmem:[%s1 + $0x68] sm:$0xff]
    %v39 = vld [vmem:[%s1 + $0x70] sm:$0xff]
    %v40 = vld [vmem:[%s1 + $0x78] sm:$0xff]
    %v41 = vld [vmem:[%s1 + $0x80] sm:$0xff]
    %v42 = vld [vmem:[%s1 + $0x88] sm:$0xff]
    %v43 = vld [vmem:[%s1 + $0x90] sm:$0xff]
    %v44 = vld [vmem:[%s1 + $0x98] sm:$0xff]
    %v45 = vld [vmem:[%s1 + $0xa0] sm:$0xff]
    %v46 = vld [vmem:[%s1 + $0xa8] sm:$0xff]
    %v47 = vld [vmem:[%s1 + $0xb0] sm:$0xff]
    %v48 = vld [vmem:[%s1 + $0xb8] sm:$0xff]
    %v49 = vld [vmem:[%s1 + $0xc0] sm:$0xff]
    %v50 = vld [vmem:[%s1 + $0xc8] sm:$0xff]
    %v51 = vld [vmem:[%s1 + $0xd0] sm:$0xff]
    %v52 = vld [vmem:[%s1 + $0xd8] sm:$0xff]
    %v53 = vld [vmem:[%s1 + $0xe0] sm:$0xff]
    %v54 = vld [vmem:[%s1 + $0xe8] sm:$0xff]
    %v55 = vld [vmem:[%s1 + $0xf0] sm:$0xff]
    %v56 = vld [vmem:[%s1 + $0xf8] sm:$0xff]
    %v57 = vld [vmem:[%s1 + $0x100] sm:$0xff]
    %v58 = vld [vmem:[%s1 + $0x108] sm:$0xff]
    %v59 = vld [vmem:[%s1 + $0x110] sm:$0xff]
    %v60 = vld [vmem:[%s1 + $0x118] sm:$0xff]
    %v61 = vld [vmem:[%s1 + $0x120] sm:$0xff]
    %v62 = vld [vmem:[%s1 + $0x128] sm:$0xff]
    %v63 = vld [vmem:[%s1 + $0x130] sm:$0xff]
    %v64 = vld [vmem:[%s1 + $0x138] sm:$0xff]
    %v65 = vld [vmem:[%s1 + $0x140] sm:$0xff]
    %v66 = vld [vmem:[%s1 + $0x148] sm:$0xff]
    %v67 = vld [vmem:[%s1 + $0x150] sm:$0xff]
    %v68 = vld [vmem:[%s1 + $0x158] sm:$0xff]
    %v69 = vld [vmem:[%s1 + $0x160] sm:$0xff]
    %v70 = vld [vmem:[%s1 + $0x168] sm:$0xff]
    %v71 = vld [vmem:[%s1 + $0x170] sm:$0xff]
    %v72 = vld [vmem:[%s1 + $0x178] sm:$0xff]
    %v73 = vld [vmem:[%s1 + $0x180] sm:$0xff]
    %v74 = vld [vmem:[%s1 + $0x188] sm:$0xff]
    %v75 = vld [vmem:[%s1 + $0x190] sm:$0xff]
    %v76 = vld [vmem:[%s1 + $0x198] sm:$0xff]
    %v77 = vld [vmem:[%s1 + $0x1a0] sm:$0xff]
    %v78 = vld [vmem:[%s1 + $0x1a8] sm:$0xff]
    %v79 = vld [vmem:[%s1 + $0x1b0] sm:$0xff]
    %v80 = vld [vmem:[%s1 + $0x1b8] sm:$0xff]
    %v81 = vld [vmem:[%s1 + $0x1c0] sm:$0xff]
    %v82 = vld [vmem:[%s1 + $0x1c8] sm:$0xff]
    %v83 = vld [vmem:[%s1 + $0x1d0] sm:$0xff]
    %v84 = vld [vmem:[%s1 + $0x1d8] sm:$0xff]
    %v85 = vld [vmem:[%s1 + $0x1e0] sm:$0xff]
    %v86 = vld [vmem:[%s1 + $0x1e8] sm:$0xff]
    %v87 = vld [vmem:[%s1 + $0x1f0] sm:$0xff]
    %v88 = vld [vmem:[%s1 + $0x1f8] sm:$0xff]
    %v89 = vld [vmem:[%s1 + $0x200] sm:$0xff]
    %v90 = vld [vmem:[%s1 + $0x208] sm:$0xff]
    %v91 = vld [vmem:[%s1 + $0x210] sm:$0xff]
    %v92 = vld [vmem:[%s1 + $0x218] sm:$0xff]
    %v93 = vld [vmem:[%s1 + $0x220] sm:$0xff]
    %v94 = vld [vmem:[%s1 + $0x228] sm:$0xff]
    %v95 = vld [vmem:[%s1 + $0x230] sm:$0xff]
    %v96 = vld [vmem:[%s1 + $0x238] sm:$0xff]
    %v97 = vld [vmem:[%s1 + $0x240] sm:$0xff]
    %v98 = vld [vmem:[%s1 + $0x248] sm:$0xff]
    %v99 = vld [vmem:[%s1 + $0x250] sm:$0xff]
    %v100 = vld [vmem:[%s1 + $0x258] sm:$0xff]
    %v101 = vld [vmem:[%s1 + $0x260] sm:$0xff]
    %v102 = vld [vmem:[%s1 + $0x268] sm:$0xff]
    %v103 = vld [vmem:[%s1 + $0x270] sm:$0xff]
    %v104 = vld [vmem:[%s1 + $0x278] sm:$0xff]
    %v105 = vld [vmem:[%s1 + $0x280] sm:$0xff]
    %v106 = vld [vmem:[%s1 + $0x288] sm:$0xff]
    %v107 = vld [vmem:[%s1 + $0x290] sm:$0xff]
    %v108 = vld [vmem:[%s1 + $0x298] sm:$0xff]
    %v109 = vld [vmem:[%s1 + $0x2a0] sm:$0xff]
    %v110 = vld [vmem:[%s1 + $0x2a8] sm:$0xff]
    %v111 = vld [vmem:[%s1 + $0x2b0] sm:$0xff]
    %v112 = vld [vmem:[%s1 + $0x2b8] sm:$0xff]
    %v113 = vld [vmem:[%s1 + $0x2c0] sm:$0xff]
    %v114 = vld [vmem:[%s1 + $0x2c8] sm:$0xff]
    %v115 = vld [vmem:[%s1 + $0x2d0] sm:$0xff]
    %v116 = vld [vmem:[%s1 + $0x2d8] sm:$0xff]
    %v117 = vld [vmem:[%s1 + $0x2e0] sm:$0xff]
    %v118 = vld [vmem:[%s1 + $0x2e8] sm:$0xff]
    %v119 = vld [vmem:[%s1 + $0x2f0] sm:$0xff]
    %v120 = vld [vmem:[%s1 + $0x2f8] sm:$0xff]
    %v121 = vld [vmem:[%s1 + $0x300] sm:$0xff]
    %v122 = vld [vmem:[%s1 + $0x308] sm:$0xff]
    %v123 = vld [vmem:[%s1 + $0x310] sm:$0xff]
    %v124 = vld [vmem:[%s1 + $0x318] sm:$0xff]
    %v125 = vld [vmem:[%s1 + $0x320] sm:$0xff]
    %v126 = vld [vmem:[%s1 + $0x328] sm:$0xff]
    %v127 = vld [vmem:[%s1 + $0x330] sm:$0xff]
    %v128 = vld [vmem:[%s1 + $0x338] sm:$0xff]
    %v129 = vld [vmem:[%s1 + $0x340] sm:$0xff]
    %v130 = vld [vmem:[%s1 + $0x348] sm:$0xff]
    %v131 = vld [vmem:[%s1 + $0x350] sm:$0xff]
    %v132 = vld [vmem:[%s1 + $0x358] sm:$0xff]
    %v133 = vld [vmem:[%s1 + $0x360] sm:$0xff]
    %v134 = vld [vmem:[%s1 + $0x368] sm:$0xff]
    %v135 = vld [vmem:[%s1 + $0x370] sm:$0xff]
    %v136 = vld [vmem:[%s1 + $0x378] sm:$0xff]
    %v137 = vld [vmem:[%s1 + $0x380] sm:$0xff]
    %v138 = vld [vmem:[%s1 + $0x388] sm:$0xff]
    %v139 = vld [vmem:[%s1 + $0x390] sm:$0xff]
    %v140 = vld [vmem:[%s1 + $0x398] sm:$0xff]
    %v141 = vld [vmem:[%s1 + $0x3a0] sm:$0xff]
    %v142 = vld [vmem:[%s1 + $0x3a8] sm:$0xff]
    %v143 = vld [vmem:[%s1 + $0x3b0] sm:$0xff]
    %v144 = vld [vmem:[%s1 + $0x3b8] sm:$0xff]
    %v145 = vld [vmem:[%s1 + $0x3c0] sm:$0xff]
    %v146 = vld [vmem:[%s1 + $0x3c8] sm:$0xff]
    %v147 = vld [vmem:[%s1 + $0x3d0] sm:$0xff]
    %v148 = vld [vmem:[%s1 + $0x3d8] sm:$0xff]
    %v149 = vld [vmem:[%s1 + $0x3e0] sm:$0xff]
    %v150 = vld [vmem:[%s1 + $0x3e8] sm:$0xff]
    %v151 = vld [vmem:[%s1 + $0x3f0] sm:$0xff]
    %v152 = vld [vmem:[%s1 + $0x3f8] sm:$0xff]
    %v153 = vld [vmem:[%s1 + $0x400] sm:$0xff]
    %v154 = vld [vmem:[%s1 + $0x408] sm:$0xff]
    %v155 = vld [vmem:[%s1 + $0x410] sm:$0xff]
    %v156 = vld [vmem:[%s1 + $0x418] sm:$0xff]
    %v157 = vld [vmem:[%s1 + $0x420] sm:$0xff]
    %v158 = vld [vmem:[%s1 + $0x428] sm:$0xff]
    %v159 = vld [vmem:[%s1 + $0x430] sm:$0xff]
    %v160 = vld [vmem:[%s1 + $0x438] sm:$0xff]
    %v161 = vld [vmem:[%s1 + $0x440] sm:$0xff]
    %v162 = vld [vmem:[%s1 + $0x448] sm:$0xff]
    %v163 = vld [vmem:[%s1 + $0x450] sm:$0xff]
    %v164 = vld [vmem:[%s1 + $0x458] sm:$0xff]
    %v165 = vld [vmem:[%s1 + $0x460] sm:$0xff]
    %v166 = vld [vmem:[%s1 + $0x468] sm:$0xff]
    %v167 = vld [vmem:[%s1 + $0x470] sm:$0xff]
    %v168 = vld [vmem:[%s1 + $0x478] sm:$0xff]
    %v169 = vld [vmem:[%s1 + $0x480] sm:$0xff]
    %v170 = vld [vmem:[%s1 + $0x488] sm:$0xff]
    %v171 = vld [vmem:[%s1 + $0x490] sm:$0xff]
    %v172 = vld [vmem:[%s1 + $0x498] sm:$0xff]
    %v173 = vld [vmem:[%s1 + $0x4a0] sm:$0xff]
    %v174 = vld [vmem:[%s1 + $0x4a8] sm:$0xff]
    %v175 = vld [vmem:[%s1 + $0x4b0] sm:$0xff]
    %v176 = vld [vmem:[%s1 + $0x4b8] sm:$0xff]
    %v177 = vld [vmem:[%s1 + $0x4c0] sm:$0xff]
    %v178 = vld [vmem:[%s1 + $0x4c8] sm:$0xff]
    %v179 = vld [vmem:[%s1 + $0x4d0] sm:$0xff]
    %v180 = vld [vmem:[%s1 + $0x4d8] sm:$0xff]
    %v181 = vld [vmem:[%s1 + $0x4e0] sm:$0xff]
    %v182 = vld [vmem:[%s1 + $0x4e8] sm:$0xff]
    %v183 = vld [vmem:[%s1 + $0x4f0] sm:$0xff]
    %v184 = vld [vmem:[%s1 + $0x4f8] sm:$0xff]
    %v185 = vld [vmem:[%s1 + $0x500] sm:$0xff]
    %v186 = vld [vmem:[%s1 + $0x508] sm:$0xff]
    %v187 = vld [vmem:[%s1 + $0x510] sm:$0xff]
    %v188 = vld [vmem:[%s1 + $0x518] sm:$0xff]
    %v189 = vld [vmem:[%s1 + $0x520] sm:$0xff]
    %v190 = vld [vmem:[%s1 + $0x528] sm:$0xff]
    %v191 = vld [vmem:[%s1 + $0x530] sm:$0xff]
    %v192 = vld [vmem:[%s1 + $0x538] sm:$0xff]
    %v193 = vld [vmem:[%s1 + $0x540] sm:$0xff]
    %v194 = vld [vmem:[%s1 + $0x548] sm:$0xff]
    %v195 = vld [vmem:[%s1 + $0x550] sm:$0xff]
    %v196 = vld [vmem:[%s1 + $0x558] sm:$0xff]
    %v197 = vld [vmem:[%s1 + $0x560] sm:$0xff]
    %v198 = vld [vmem:[%s1 + $0x568] sm:$0xff]
    %v199 = vld [vmem:[%s1 + $0x570] sm:$0xff]
    %v200 = vld [vmem:[%s1 + $0x578] sm:$0xff]
    %v201 = vld [vmem:[%s1 + $0x580] sm:$0xff]
    %v202 = vld [vmem:[%s1 + $0x588] sm:$0xff]
    %v203 = vld [vmem:[%s1 + $0x590] sm:$0xff]
    %v204 = vld [vmem:[%s1 + $0x598] sm:$0xff]
    %v205 = vld [vmem:[%s1 + $0x5a0] sm:$0xff]
    %v206 = vld [vmem:[%s1 + $0x5a8] sm:$0xff]
    %v207 = vld [vmem:[%s1 + $0x5b0] sm:$0xff]
    %v208 = vld [vmem:[%s1 + $0x5b8] sm:$0xff]
    %v209 = vld [vmem:[%s1 + $0x5c0] sm:$0xff]
    %v210 = vld [vmem:[%s1 + $0x5c8] sm:$0xff]
    %v211 = vld [vmem:[%s1 + $0x5d0] sm:$0xff]
    %v212 = vld [vmem:[%s1 + $0x5d8] sm:$0xff]
    %v213 = vld [vmem:[%s1 + $0x5e0] sm:$0xff]
    %v214 = vld [vmem:[%s1 + $0x5e8] sm:$0xff]
    %v215 = vld [vmem:[%s1 + $0x5f0] sm:$0xff]
    %v216 = vld [vmem:[%s1 + $0x5f8] sm:$0xff]
    %v217 = vld [vmem:[%s1 + $0x600] sm:$0xff]
    %v218 = vld [vmem:[%s1 + $0x608] sm:$0xff]
    %v219 = vld [vmem:[%s1 + $0x610] sm:$0xff]
    %v220 = vld [vmem:[%s1 + $0x618] sm:$0xff]
    %v221 = vld [vmem:[%s1 + $0x620] sm:$0xff]
    %v222 = vld [vmem:[%s1 + $0x628] sm:$0xff]
    %v223 = vld [vmem:[%s1 + $0x630] sm:$0xff]
    %v224 = vld [vmem:[%s1 + $0x638] sm:$0xff]
    %v225 = vld [vmem:[%s1 + $0x640] sm:$0xff]
    %v226 = vld [vmem:[%s1 + $0x648] sm:$0xff]
    %v227 = vld [vmem:[%s1 + $0x650] sm:$0xff]
    %v228 = vld [vmem:[%s1 + $0x658] sm:$0xff]
    %v229 = vld [vmem:[%s1 + $0x660] sm:$0xff]
    %v230 = vld [vmem:[%s1 + $0x668] sm:$0xff]
    %v231 = vld [vmem:[%s1 + $0x670] sm:$0xff]
    %v232 = vld [vmem:[%s1 + $0x678] sm:$0xff]
    %v233 = vld [vmem:[%s1 + $0x680] sm:$0xff]
    %v234 = vld [vmem:[%s1 + $0x688] sm:$0xff]
    %v235 = vld [vmem:[%s1 + $0x690] sm:$0xff]
    %v236 = vld [vmem:[%s1 + $0x698] sm:$0xff]
    %v237 = vld [vmem:[%s1 + $0x6a0] sm:$0xff]
    %v238 = vld [vmem:[%s1 + $0x6a8] sm:$0xff]
    %v239 = vld [vmem:[%s1 + $0x6b0] sm:$0xff]
    %v240 = vld [vmem:[%s1 + $0x6b8] sm:$0xff]
    %v241 = vld [vmem:[%s1 + $0x6c0] sm:$0xff]
    %v242 = vld [vmem:[%s1 + $0x6c8] sm:$0xff]
    %v243 = vld [vmem:[%s1 + $0x6d0] sm:$0xff]
    %v244 = vld [vmem:[%s1 + $0x6d8] sm:$0xff]
    %v245 = vld [vmem:[%s1 + $0x6e0] sm:$0xff]
    %v246 = vld [vmem:[%s1 + $0x6e8] sm:$0xff]
    %v247 = vld [vmem:[%s1 + $0x6f0] sm:$0xff]
    %v248 = vld [vmem:[%s1 + $0x6f8] sm:$0xff]
    %v249 = vld [vmem:[%s1 + $0x700] sm:$0xff]
    %v250 = vld [vmem:[%s1 + $0x708] sm:$0xff]
    %v251 = vld [vmem:[%s1 + $0x710] sm:$0xff]
    %v252 = vld [vmem:[%s1 + $0x718] sm:$0xff]
    %v253 = vld [vmem:[%s1 + $0x720] sm:$0xff]
    %v254 = vld [vmem:[%s1 + $0x728] sm:$0xff]
    %v255 = vld [vmem:[%s1 + $0x730] sm:$0xff]
    %v256 = vld [vmem:[%s1 + $0x738] sm:$0xff]
    %v257 = vld [vmem:[%s1 + $0x740] sm:$0xff]
    %v258 = vld [vmem:[%s1 + $0x748] sm:$0xff]
    %v259 = vld [vmem:[%s1 + $0x750] sm:$0xff]
    %v260 = vld [vmem:[%s1 + $0x758] sm:$0xff]
    %v261 = vld [vmem:[%s1 + $0x760] sm:$0xff]
    %v262 = vld [vmem:[%s1 + $0x768] sm:$0xff]
    %v263 = vld [vmem:[%s1 + $0x770] sm:$0xff]
    %v264 = vld [vmem:[%s1 + $0x778] sm:$0xff]
    %v265 = vld [vmem:[%s1 + $0x780] sm:$0xff]
    %v266 = vld [vmem:[%s1 + $0x788] sm:$0xff]
    %v267 = vld [vmem:[%s1 + $0x790] sm:$0xff]
    %v268 = vld [vmem:[%s1 + $0x798] sm:$0xff]
    %v269 = vld [vmem:[%s1 + $0x7a0] sm:$0xff]
    %v270 = vld [vmem:[%s1 + $0x7a8] sm:$0xff]
    %v271 = vld [vmem:[%s1 + $0x7b0] sm:$0xff]
    %v272 = vld [vmem:[%s1 + $0x7b8] sm:$0xff]
    %v273 = vld [vmem:[%s1 + $0x7c0] sm:$0xff]
    %v274 = vld [vmem:[%s1 + $0x7c8] sm:$0xff]
    %v275 = vld [vmem:[%s1 + $0x7d0] sm:$0xff]
    %v276 = vld [vmem:[%s1 + $0x7d8] sm:$0xff]
    %v277 = vld [vmem:[%s1 + $0x7e0] sm:$0xff]
    %v278 = vld [vmem:[%s1 + $0x7e8] sm:$0xff]
    %v279 = vld [vmem:[%s1 + $0x7f0] sm:$0xff]
    %v280 = vld [vmem:[%s1 + $0x7f8] sm:$0xff]
    %v281 = vld [vmem:[%s1 + $0x800] sm:$0xff]
    %v282 = vld [vmem:[%s1 + $0x808] sm:$0xff]
    %v283 = vld [vmem:[%s1 + $0x810] sm:$0xff]
    %v284 = vld [vmem:[%s1 + $0x818] sm:$0xff]
    %v285 = vld [vmem:[%s1 + $0x820] sm:$0xff]
    %v286 = vld [vmem:[%s1 + $0x828] sm:$0xff]
    %v287 = vld [vmem:[%s1 + $0x830] sm:$0xff]
    %v288 = vld [vmem:[%s1 + $0x838] sm:$0xff]
    %v289 = vld [vmem:[%s1 + $0x840] sm:$0xff]
    %v290 = vld [vmem:[%s1 + $0x848] sm:$0xff]
    %v291 = vld [vmem:[%s1 + $0x850] sm:$0xff]
    %v292 = vld [vmem:[%s1 + $0x858] sm:$0xff]
    %v293 = vld [vmem:[%s1 + $0x860] sm:$0xff]
    %v294 = vld [vmem:[%s1 + $0x868] sm:$0xff]
    %v295 = vld [vmem:[%s1 + $0x870] sm:$0xff]
    %v296 = vld [vmem:[%s1 + $0x878] sm:$0xff]
    %v297 = vld [vmem:[%s1 + $0x880] sm:$0xff]
    %v298 = vld [vmem:[%s1 + $0x888] sm:$0xff]
    %v299 = vld [vmem:[%s1 + $0x890] sm:$0xff]
    %v300 = vld [vmem:[%s1 + $0x898] sm:$0xff]
    %v301 = vld [vmem:[%s1 + $0x8a0] sm:$0xff]
    %v302 = vld [vmem:[%s1 + $0x8a8] sm:$0xff]
    %v303 = vld [vmem:[%s1 + $0x8b0] sm:$0xff]
    %v304 = vld [vmem:[%s1 + $0x8b8] sm:$0xff]
    %v305 = vld [vmem:[%s1 + $0x8c0] sm:$0xff]
    %v306 = vld [vmem:[%s1 + $0x8c8] sm:$0xff]
    %v307 = vld [vmem:[%s1 + $0x8d0] sm:$0xff]
    %v308 = vld [vmem:[%s1 + $0x8d8] sm:$0xff]
    %v309 = vld [vmem:[%s1 + $0x8e0] sm:$0xff]
    %v310 = vld [vmem:[%s1 + $0x8e8] sm:$0xff]
    %v311 = vld [vmem:[%s1 + $0x8f0] sm:$0xff]
    %v312 = vld [vmem:[%s1 + $0x8f8] sm:$0xff]
    %v313 = vld [vmem:[%s1 + $0x900] sm:$0xff]
    %v314 = vld [vmem:[%s1 + $0x908] sm:$0xff]
    %v315 = vld [vmem:[%s1 + $0x910] sm:$0xff]
    %v316 = vld [vmem:[%s1 + $0x918] sm:$0xff]
    %v317 = vld [vmem:[%s1 + $0x920] sm:$0xff]
    %v318 = vld [vmem:[%s1 + $0x928] sm:$0xff]
    %v319 = vld [vmem:[%s1 + $0x930] sm:$0xff]
    %v320 = vld [vmem:[%s1 + $0x938] sm:$0xff]
    %v321 = vld [vmem:[%s1 + $0x940] sm:$0xff]
    %v322 = vld [vmem:[%s1 + $0x948] sm:$0xff]
    %v323 = vld [vmem:[%s1 + $0x950] sm:$0xff]
    %v324 = vld [vmem:[%s1 + $0x958] sm:$0xff]
    %v325 = vld [vmem:[%s1 + $0x960] sm:$0xff]
    %v326 = vld [vmem:[%s1 + $0x968] sm:$0xff]
    %v327 = vld [vmem:[%s1 + $0x970] sm:$0xff]
    %v328 = vld [vmem:[%s1 + $0x978] sm:$0xff]
    %v329 = vld [vmem:[%s1 + $0x980] sm:$0xff]
    %v330 = vld [vmem:[%s1 + $0x988] sm:$0xff]
    %v331 = vld [vmem:[%s1 + $0x990] sm:$0xff]
    %v332 = vld [vmem:[%s1 + $0x998] sm:$0xff]
    %v333 = vld [vmem:[%s1 + $0x9a0] sm:$0xff]
    %v334 = vld [vmem:[%s1 + $0x9a8] sm:$0xff]
    %v335 = vld [vmem:[%s1 + $0x9b0] sm:$0xff]
    %v336 = vld [vmem:[%s1 + $0x9b8] sm:$0xff]
    %v337 = vld [vmem:[%s1 + $0x9c0] sm:$0xff]
    %v338 = vld [vmem:[%s1 + $0x9c8] sm:$0xff]
    %v339 = vld [vmem:[%s1 + $0x9d0] sm:$0xff]
    %v340 = vld [vmem:[%s1 + $0x9d8] sm:$0xff]
    %v341 = vld [vmem:[%s1 + $0x9e0] sm:$0xff]
    %v342 = vld [vmem:[%s1 + $0x9e8] sm:$0xff]
    %v343 = vld [vmem:[%s1 + $0x9f0] sm:$0xff]
    %v344 = vld [vmem:[%s1 + $0x9f8] sm:$0xff]
    %v345 = vld [vmem:[%s1 + $0xa00] sm:$0xff]
    %v346 = vld [vmem:[%s1 + $0xa08] sm:$0xff]
    %v347 = vld [vmem:[%s1 + $0xa10] sm:$0xff]
    %v348 = vld [vmem:[%s1 + $0xa18] sm:$0xff]
    %v349 = vld [vmem:[%s1 + $0xa20] sm:$0xff]
    %v350 = vld [vmem:[%s1 + $0xa28] sm:$0xff]
    %v351 = vld [vmem:[%s1 + $0xa30] sm:$0xff]
    %v352 = vld [vmem:[%s1 + $0xa38] sm:$0xff]
    %v353 = vld [vmem:[%s1 + $0xa40] sm:$0xff]
    %v354 = vld [vmem:[%s1 + $0xa48] sm:$0xff]
    %v355 = vld [vmem:[%s1 + $0xa50] sm:$0xff]
    %v356 = vld [vmem:[%s1 + $0xa58] sm:$0xff]
    %v357 = vld [vmem:[%s1 + $0xa60] sm:$0xff]
    %v358 = vld [vmem:[%s1 + $0xa68] sm:$0xff]
    %v359 = vld [vmem:[%s1 + $0xa70] sm:$0xff]
    %v360 = vld [vmem:[%s1 + $0xa78] sm:$0xff]
    %v361 = vld [vmem:[%s1 + $0xa80] sm:$0xff]
    %v362 = vld [vmem:[%s1 + $0xa88] sm:$0xff]
    %v363 = vld [vmem:[%s1 + $0xa90] sm:$0xff]
    %v364 = vld [vmem:[%s1 + $0xa98] sm:$0xff]
    %v365 = vld [vmem:[%s1 + $0xaa0] sm:$0xff]
    %v366 = vld [vmem:[%s1 + $0xaa8] sm:$0xff]
    %v367 = vld [vmem:[%s1 + $0xab0] sm:$0xff]
    %v368 = vld [vmem:[%s1 + $0xab8] sm:$0xff]
    %v369 = vld [vmem:[%s1 + $0xac0] sm:$0xff]
    %v370 = vld [vmem:[%s1 + $0xac8] sm:$0xff]
    %v371 = vld [vmem:[%s1 + $0xad0] sm:$0xff]
    %v372 = vld [vmem:[%s1 + $0xad8] sm:$0xff]
    %v373 = vld [vmem:[%s1 + $0xae0] sm:$0xff]
    %v374 = vld [vmem:[%s1 + $0xae8] sm:$0xff]
    %v375 = vld [vmem:[%s1 + $0xaf0] sm:$0xff]
    %v376 = vld [vmem:[%s1 + $0xaf8] sm:$0xff]
    %v377 = vld [vmem:[%s1 + $0xb00] sm:$0xff]
    %v378 = vld [vmem:[%s1 + $0xb08] sm:$0xff]
    %v379 = vld [vmem:[%s1 + $0xb10] sm:$0xff]
    %v380 = vld [vmem:[%s1 + $0xb18] sm:$0xff]
    %v381 = vld [vmem:[%s1 + $0xb20] sm:$0xff]
    %v382 = vld [vmem:[%s1 + $0xb28] sm:$0xff]
    %v383 = vld [vmem:[%s1 + $0xb30] sm:$0xff]
    %v384 = vld [vmem:[%s1 + $0xb38] sm:$0xff]
    %v385 = vld [vmem:[%s1 + $0xb40] sm:$0xff]
    %v386 = vld [vmem:[%s1 + $0xb48] sm:$0xff]
    %v387 = vld [vmem:[%s1 + $0xb50] sm:$0xff]
    %v388 = vld [vmem:[%s1 + $0xb58] sm:$0xff]
    %v389 = vld [vmem:[%s1 + $0xb60] sm:$0xff]
    %v390 = vld [vmem:[%s1 + $0xb68] sm:$0xff]
    %v391 = vld [vmem:[%s1 + $0xb70] sm:$0xff]
    %v392 = vld [vmem:[%s1 + $0xb78] sm:$0xff]
    %v393 = vld [vmem:[%s1 + $0xb80] sm:$0xff]
    %v394 = vld [vmem:[%s1 + $0xb88] sm:$0xff]
    %v395 = vld [vmem:[%s1 + $0xb90] sm:$0xff]
    %v396 = vld [vmem:[%s1 + $0xb98] sm:$0xff]
    %v397 = vld [vmem:[%s1 + $0xba0] sm:$0xff]
    %v398 = vld [vmem:[%s1 + $0xba8] sm:$0xff]
    %v399 = vld [vmem:[%s1 + $0xbb0] sm:$0xff]
    %v400 = vld [vmem:[%s1 + $0xbb8] sm:$0xff]
    %v401 = vld [vmem:[%s1 + $0xbc0] sm:$0xff]
    %v402 = vld [vmem:[%s1 + $0xbc8] sm:$0xff]
    %v403 = vld [vmem:[%s1 + $0xbd0] sm:$0xff]
    %v404 = vld [vmem:[%s1 + $0xbd8] sm:$0xff]
    %v405 = vld [vmem:[%s1 + $0xbe0] sm:$0xff]
    %v406 = vld [vmem:[%s1 + $0xbe8] sm:$0xff]
    %v407 = vld [vmem:[%s1 + $0xbf0] sm:$0xff]
    %v408 = vld [vmem:[%s1 + $0xbf8] sm:$0xff]
    %v409 = vld [vmem:[%s1 + $0xc00] sm:$0xff]
    %v410 = vld [vmem:[%s1 + $0xc08] sm:$0xff]
    %v411 = vld [vmem:[%s1 + $0xc10] sm:$0xff]
    %v412 = vld [vmem:[%s1 + $0xc18] sm:$0xff]
    %v413 = vld [vmem:[%s1 + $0xc20] sm:$0xff]
    %v414 = vld [vmem:[%s1 + $0xc28] sm:$0xff]
    %v415 = vld [vmem:[%s1 + $0xc30] sm:$0xff]
    %v416 = vld [vmem:[%s1 + $0xc38] sm:$0xff]
    %v417 = vld [vmem:[%s1 + $0xc40] sm:$0xff]
    %v418 = vld [vmem:[%s1 + $0xc48] sm:$0xff]
    %v419 = vld [vmem:[%s1 + $0xc50] sm:$0xff]
    %v420 = vld [vmem:[%s1 + $0xc58] sm:$0xff]
    %v421 = vld [vmem:[%s1 + $0xc60] sm:$0xff]
    %v422 = vld [vmem:[%s1 + $0xc68] sm:$0xff]
    %v423 = vld [vmem:[%s1 + $0xc70] sm:$0xff]
    %v424 = vld [vmem:[%s1 + $0xc78] sm:$0xff]
    %v425 = vld [vmem:[%s1 + $0xc80] sm:$0xff]
    %v426 = vld [vmem:[%s1 + $0xc88] sm:$0xff]
    %v427 = vld [vmem:[%s1 + $0xc90] sm:$0xff]
    %v428 = vld [vmem:[%s1 + $0xc98] sm:$0xff]
    %v429 = vld [vmem:[%s1 + $0xca0] sm:$0xff]
    %v430 = vld [vmem:[%s1 + $0xca8] sm:$0xff]
    %v431 = vld [vmem:[%s1 + $0xcb0] sm:$0xff]
    %v432 = vld [vmem:[%s1 + $0xcb8] sm:$0xff]
    %v433 = vld [vmem:[%s1 + $0xcc0] sm:$0xff]
    %v434 = vld [vmem:[%s1 + $0xcc8] sm:$0xff]
    %v435 = vld [vmem:[%s1 + $0xcd0] sm:$0xff]
    %v436 = vld [vmem:[%s1 + $0xcd8] sm:$0xff]
    %v437 = vld [vmem:[%s1 + $0xce0] sm:$0xff]
    %v438 = vld [vmem:[%s1 + $0xce8] sm:$0xff]
    %v439 = vld [vmem:[%s1 + $0xcf0] sm:$0xff]
    %v440 = vld [vmem:[%s1 + $0xcf8] sm:$0xff]
    %v441 = vld [vmem:[%s1 + $0xd00] sm:$0xff]
    %v442 = vld [vmem:[%s1 + $0xd08] sm:$0xff]
    %v443 = vld [vmem:[%s1 + $0xd10] sm:$0xff]
    %v444 = vld [vmem:[%s1 + $0xd18] sm:$0xff]
    %v445 = vld [vmem:[%s1 + $0xd20] sm:$0xff]
    %v446 = vld [vmem:[%s1 + $0xd28] sm:$0xff]
    %v447 = vld [vmem:[%s1 + $0xd30] sm:$0xff]
    %v448 = vld [vmem:[%s1 + $0xd38] sm:$0xff]
    %v449 = vld [vmem:[%s1 + $0xd40] sm:$0xff]
    %v450 = vld [vmem:[%s1 + $0xd48] sm:$0xff]
    %v451 = vld [vmem:[%s1 + $0xd50] sm:$0xff]
    %v452 = vld [vmem:[%s1 + $0xd58] sm:$0xff]
    %v453 = vld [vmem:[%s1 + $0xd60] sm:$0xff]
    %v454 = vld [vmem:[%s1 + $0xd68] sm:$0xff]
    %v455 = vld [vmem:[%s1 + $0xd70] sm:$0xff]
    %v456 = vld [vmem:[%s1 + $0xd78] sm:$0xff]
    %v457 = vld [vmem:[%s1 + $0xd80] sm:$0xff]
    %v458 = vld [vmem:[%s1 + $0xd88] sm:$0xff]
    %v459 = vld [vmem:[%s1 + $0xd90] sm:$0xff]
    %v460 = vld [vmem:[%s1 + $0xd98] sm:$0xff]
    %v461 = vld [vmem:[%s1 + $0xda0] sm:$0xff]
    %v462 = vld [vmem:[%s1 + $0xda8] sm:$0xff]
    %v463 = vld [vmem:[%s1 + $0xdb0] sm:$0xff]
    %v464 = vld [vmem:[%s1 + $0xdb8] sm:$0xff]
    %v465 = vld [vmem:[%s1 + $0xdc0] sm:$0xff]
    %v466 = vld [vmem:[%s1 + $0xdc8] sm:$0xff]
    %v467 = vld [vmem:[%s1 + $0xdd0] sm:$0xff]
    %v468 = vld [vmem:[%s1 + $0xdd8] sm:$0xff]
    %v469 = vld [vmem:[%s1 + $0xde0] sm:$0xff]
    %v470 = vld [vmem:[%s1 + $0xde8] sm:$0xff]
    %v471 = vld [vmem:[%s1 + $0xdf0] sm:$0xff]
    %v472 = vld [vmem:[%s1 + $0xdf8] sm:$0xff]
    %v473 = vld [vmem:[%s1 + $0xe00] sm:$0xff]
    %v474 = vld [vmem:[%s1 + $0xe08] sm:$0xff]
    %v475 = vld [vmem:[%s1 + $0xe10] sm:$0xff]
    %v476 = vld [vmem:[%s1 + $0xe18] sm:$0xff]
    %v477 = vld [vmem:[%s1 + $0xe20] sm:$0xff]
    %v478 = vld [vmem:[%s1 + $0xe28] sm:$0xff]
    %v479 = vld [vmem:[%s1 + $0xe30] sm:$0xff]
    %v480 = vld [vmem:[%s1 + $0xe38] sm:$0xff]
    %v481 = vld [vmem:[%s1 + $0xe40] sm:$0xff]
    %v482 = vld [vmem:[%s1 + $0xe48] sm:$0xff]
    %v483 = vld [vmem:[%s1 + $0xe50] sm:$0xff]
    %v484 = vld [vmem:[%s1 + $0xe58] sm:$0xff]
    %v485 = vld [vmem:[%s1 + $0xe60] sm:$0xff]
    %v486 = vld [vmem:[%s1 + $0xe68] sm:$0xff]
    %v487 = vld [vmem:[%s1 + $0xe70] sm:$0xff]
    %v488 = vld [vmem:[%s1 + $0xe78] sm:$0xff]
    %v489 = vld [vmem:[%s1 + $0xe80] sm:$0xff]
    %v490 = vld [vmem:[%s1 + $0xe88] sm:$0xff]
    %v491 = vld [vmem:[%s1 + $0xe90] sm:$0xff]
    %v492 = vld [vmem:[%s1 + $0xe98] sm:$0xff]
    %v493 = vld [vmem:[%s1 + $0xea0] sm:$0xff]
    %v494 = vld [vmem:[%s1 + $0xea8] sm:$0xff]
    %v495 = vld [vmem:[%s1 + $0xeb0] sm:$0xff]
    %v496 = vld [vmem:[%s1 + $0xeb8] sm:$0xff]
    %v497 = vld [vmem:[%s1 + $0xec0] sm:$0xff]
    %v498 = vld [vmem:[%s1 + $0xec8] sm:$0xff]
    %v499 = vld [vmem:[%s1 + $0xed0] sm:$0xff]
    %v500 = vld [vmem:[%s1 + $0xed8] sm:$0xff]
    %v501 = vld [vmem:[%s1 + $0xee0] sm:$0xff]
    %v502 = vld [vmem:[%s1 + $0xee8] sm:$0xff]
    %v503 = vld [vmem:[%s1 + $0xef0] sm:$0xff]
    %v504 = vld [vmem:[%s1 + $0xef8] sm:$0xff]
    %v505 = vld [vmem:[%s1 + $0xf00] sm:$0xff]
    %v506 = vld [vmem:[%s1 + $0xf08] sm:$0xff]
    %v507 = vld [vmem:[%s1 + $0xf10] sm:$0xff]
    %v508 = vld [vmem:[%s1 + $0xf18] sm:$0xff]
    %v509 = vld [vmem:[%s1 + $0xf20] sm:$0xff]
    %v510 = vld [vmem:[%s1 + $0xf28] sm:$0xff]
    %v511 = vld [vmem:[%s1 + $0xf30] sm:$0xff]
    %v512 = vld [vmem:[%s1 + $0xf38] sm:$0xff]
    %v513 = vld [vmem:[%s1 + $0xf40] sm:$0xff]
    %v514 = vld [vmem:[%s1 + $0xf48] sm:$0xff]
    %v515 = vld [vmem:[%s1 + $0xf50] sm:$0xff]
    %v516 = vld [vmem:[%s1 + $0xf58] sm:$0xff]
    %v517 = vld [vmem:[%s1 + $0xf60] sm:$0xff]
    %v518 = vld [vmem:[%s1 + $0xf68] sm:$0xff]
    %v519 = vld [vmem:[%s1 + $0xf70] sm:$0xff]
    %v520 = vld [vmem:[%s1 + $0xf78] sm:$0xff]
    %v521 = vld [vmem:[%s1 + $0xf80] sm:$0xff]
    %v522 = vld [vmem:[%s1 + $0xf88] sm:$0xff]
    %v523 = vld [vmem:[%s1 + $0xf90] sm:$0xff]
    %v524 = vld [vmem:[%s1 + $0xf98] sm:$0xff]
    %v525 = vld [vmem:[%s1 + $0xfa0] sm:$0xff]
    %v526 = vld [vmem:[%s1 + $0xfa8] sm:$0xff]
    %v527 = vld [vmem:[%s1 + $0xfb0] sm:$0xff]
    %v528 = vld [vmem:[%s1 + $0xfb8] sm:$0xff]
    %v529 = vld [vmem:[%s1 + $0xfc0] sm:$0xff]
    %v530 = vld [vmem:[%s1 + $0xfc8] sm:$0xff]
    %v531 = vld [vmem:[%s1 + $0xfd0] sm:$0xff]
    %v532 = vld [vmem:[%s1 + $0xfd8] sm:$0xff]
    %v533 = vld [vmem:[%s1 + $0xfe0] sm:$0xff]
    %v534 = vld [vmem:[%s1 + $0xfe8] sm:$0xff]
    %v535 = vld [vmem:[%s1 + $0xff0] sm:$0xff]
    %v536 = vld [vmem:[%s1 + $0xff8] sm:$0xff]
    %v537 = vld [vmem:[%s1 + $0x1000] sm:$0xff]
    %v538 = vld [vmem:[%s1 + $0x1008] sm:$0xff]
    %v539 = vld [vmem:[%s1 + $0x1010] sm:$0xff]
    %v540 = vld [vmem:[%s1 + $0x1018] sm:$0xff]
    %v541 = vld [vmem:[%s1 + $0x1020] sm:$0xff]
    %v542 = vld [vmem:[%s1 + $0x1028] sm:$0xff]
    %v543 = vld [vmem:[%s1 + $0x1030] sm:$0xff]
    %v544 = vld [vmem:[%s1 + $0x1038] sm:$0xff]
    %v545 = vld [vmem:[%s1 + $0x1040] sm:$0xff]
    %v546 = vld [vmem:[%s1 + $0x1048] sm:$0xff]
    %v547 = vld [vmem:[%s1 + $0x1050] sm:$0xff]
    %v548 = vld [vmem:[%s1 + $0x1058] sm:$0xff]
    %v549 = vld [vmem:[%s1 + $0x1060] sm:$0xff]
    %v550 = vld [vmem:[%s1 + $0x1068] sm:$0xff]
    %v551 = vld [vmem:[%s1 + $0x1070] sm:$0xff]
    %v552 = vld [vmem:[%s1 + $0x1078] sm:$0xff]
    %v553 = vld [vmem:[%s1 + $0x1080] sm:$0xff]
    %v554 = vld [vmem:[%s1 + $0x1088] sm:$0xff]
    %v555 = vld [vmem:[%s1 + $0x1090] sm:$0xff]
    %v556 = vld [vmem:[%s1 + $0x1098] sm:$0xff]
    %v557 = vld [vmem:[%s1 + $0x10a0] sm:$0xff]
    %v558 = vld [vmem:[%s1 + $0x10a8] sm:$0xff]
    %v559 = vld [vmem:[%s1 + $0x10b0] sm:$0xff]
    %v560 = vld [vmem:[%s1 + $0x10b8] sm:$0xff]
    %v561 = vld [vmem:[%s1 + $0x10c0] sm:$0xff]
    %v562 = vld [vmem:[%s1 + $0x10c8] sm:$0xff]
    %v563 = vld [vmem:[%s1 + $0x10d0] sm:$0xff]
    %v564 = vld [vmem:[%s1 + $0x10d8] sm:$0xff]
    %v565 = vld [vmem:[%s1 + $0x10e0] sm:$0xff]
    %v566 = vld [vmem:[%s1 + $0x10e8] sm:$0xff]
    %v567 = vld [vmem:[%s1 + $0x10f0] sm:$0xff]
    %v568 = vld [vmem:[%s1 + $0x10f8] sm:$0xff]
    %v569 = vld [vmem:[%s1 + $0x1100] sm:$0xff]
    %v570 = vld [vmem:[%s1 + $0x1108] sm:$0xff]
    %v571 = vld [vmem:[%s1 + $0x1110] sm:$0xff]
    %v572 = vld [vmem:[%s1 + $0x1118] sm:$0xff]
    %v573 = vld [vmem:[%s1 + $0x1120] sm:$0xff]
    %v574 = vld [vmem:[%s1 + $0x1128] sm:$0xff]
    %v575 = vld [vmem:[%s1 + $0x1130] sm:$0xff]
    %v576 = vld [vmem:[%s1 + $0x1138] sm:$0xff]
    %v577 = vld [vmem:[%s1 + $0x1140] sm:$0xff]
    %v578 = vld [vmem:[%s1 + $0x1148] sm:$0xff]
    %v579 = vld [vmem:[%s1 + $0x1150] sm:$0xff]
    %v580 = vld [vmem:[%s1 + $0x1158] sm:$0xff]
    %v581 = vld [vmem:[%s1 + $0x1160] sm:$0xff]
    %v582 = vld [vmem:[%s1 + $0x1168] sm:$0xff]
    %v583 = vld [vmem:[%s1 + $0x1170] sm:$0xff]
    %v584 = vld [vmem:[%s1 + $0x1178] sm:$0xff]
    %v585 = vld [vmem:[%s1 + $0x1180] sm:$0xff]
    %v586 = vld [vmem:[%s1 + $0x1188] sm:$0xff]
    %v587 = vld [vmem:[%s1 + $0x1190] sm:$0xff]
    %v588 = vld [vmem:[%s1 + $0x1198] sm:$0xff]
    %v589 = vld [vmem:[%s1 + $0x11a0] sm:$0xff]
    %v590 = vld [vmem:[%s1 + $0x11a8] sm:$0xff]
    %v591 = vld [vmem:[%s1 + $0x11b0] sm:$0xff]
    %v592 = vld [vmem:[%s1 + $0x11b8] sm:$0xff]
    %v593 = vld [vmem:[%s1 + $0x11c0] sm:$0xff]
    %v594 = vld [vmem:[%s1 + $0x11c8] sm:$0xff]
    %v595 = vld [vmem:[%s1 + $0x11d0] sm:$0xff]
    %v596 = vld [vmem:[%s1 + $0x11d8] sm:$0xff]
    %v597 = vld [vmem:[%s1 + $0x11e0] sm:$0xff]
    %v598 = vld [vmem:[%s1 + $0x11e8] sm:$0xff]
    %v599 = vld [vmem:[%s1 + $0x11f0] sm:$0xff]
    %v600 = vld [vmem:[%s1 + $0x11f8] sm:$0xff]
    %v601 = vld [vmem:[%s1 + $0x1200] sm:$0xff]
    %v602 = vld [vmem:[%s1 + $0x1208] sm:$0xff]
    %v603 = vld [vmem:[%s1 + $0x1210] sm:$0xff]
    %v604 = vld [vmem:[%s1 + $0x1218] sm:$0xff]
    %v605 = vld [vmem:[%s1 + $0x1220] sm:$0xff]
    %v606 = vld [vmem:[%s1 + $0x1228] sm:$0xff]
    %v607 = vld [vmem:[%s1 + $0x1230] sm:$0xff]
    %v608 = vld [vmem:[%s1 + $0x1238] sm:$0xff]
    %v609 = vld [vmem:[%s1 + $0x1240] sm:$0xff]
    %v610 = vld [vmem:[%s1 + $0x1248] sm:$0xff]
    %v611 = vld [vmem:[%s1 + $0x1250] sm:$0xff]
    %v612 = vld [vmem:[%s1 + $0x1258] sm:$0xff]
    %v613 = vld [vmem:[%s1 + $0x1260] sm:$0xff]
    %v614 = vld [vmem:[%s1 + $0x1268] sm:$0xff]
    %v615 = vld [vmem:[%s1 + $0x1270] sm:$0xff]
    %v616 = vld [vmem:[%s1 + $0x1278] sm:$0xff]
    %v617 = vld [vmem:[%s1 + $0x1280] sm:$0xff]
    %v618 = vld [vmem:[%s1 + $0x1288] sm:$0xff]
    %v619 = vld [vmem:[%s1 + $0x1290] sm:$0xff]
    %v620 = vld [vmem:[%s1 + $0x1298] sm:$0xff]
    %v621 = vld [vmem:[%s1 + $0x12a0] sm:$0xff]
    %v622 = vld [vmem:[%s1 + $0x12a8] sm:$0xff]
    %v623 = vld [vmem:[%s1 + $0x12b0] sm:$0xff]
    %v624 = vld [vmem:[%s1 + $0x12b8] sm:$0xff]
    %v625 = vld [vmem:[%s1 + $0x12c0] sm:$0xff]
    %v626 = vld [vmem:[%s1 + $0x12c8] sm:$0xff]
    %v627 = vld [vmem:[%s1 + $0x12d0] sm:$0xff]
    %v628 = vld [vmem:[%s1 + $0x12d8] sm:$0xff]
    %v629 = vld [vmem:[%s1 + $0x12e0] sm:$0xff]
    %v630 = vld [vmem:[%s1 + $0x12e8] sm:$0xff]
    %v631 = vld [vmem:[%s1 + $0x12f0] sm:$0xff]
    %v632 = vld [vmem:[%s1 + $0x12f8] sm:$0xff]
    %v633 = vld [vmem:[%s1 + $0x1300] sm:$0xff]
    %v634 = vld [vmem:[%s1 + $0x1308] sm:$0xff]
    %v635 = vld [vmem:[%s1 + $0x1310] sm:$0xff]
    %v636 = vld [vmem:[%s1 + $0x1318] sm:$0xff]
    %v637 = vld [vmem:[%s1 + $0x1320] sm:$0xff]
    %v638 = vld [vmem:[%s1 + $0x1328] sm:$0xff]
    %v639 = vld [vmem:[%s1 + $0x1330] sm:$0xff]
    %v640 = vld [vmem:[%s1 + $0x1338] sm:$0xff]
    %v641 = vld [vmem:[%s1 + $0x1340] sm:$0xff]
    %v642 = vld [vmem:[%s1 + $0x1348] sm:$0xff]
    %v643 = vld [vmem:[%s1 + $0x1350] sm:$0xff]
    %v644 = vld [vmem:[%s1 + $0x1358] sm:$0xff]
    %v645 = vld [vmem:[%s1 + $0x1360] sm:$0xff]
    %v646 = vld [vmem:[%s1 + $0x1368] sm:$0xff]
    %v647 = vld [vmem:[%s1 + $0x1370] sm:$0xff]
    %v648 = vld [vmem:[%s1 + $0x1378] sm:$0xff]
    %v649 = vld [vmem:[%s1 + $0x1380] sm:$0xff]
    %v650 = vld [vmem:[%s1 + $0x1388] sm:$0xff]
    %v651 = vld [vmem:[%s1 + $0x1390] sm:$0xff]
    %v652 = vld [vmem:[%s1 + $0x1398] sm:$0xff]
    %v653 = vld [vmem:[%s1 + $0x13a0] sm:$0xff]
    %v654 = vld [vmem:[%s1 + $0x13a8] sm:$0xff]
    %v655 = vld [vmem:[%s1 + $0x13b0] sm:$0xff]
    %v656 = vld [vmem:[%s1 + $0x13b8] sm:$0xff]
    %v657 = vld [vmem:[%s1 + $0x13c0] sm:$0xff]
    %v658 = vld [vmem:[%s1 + $0x13c8] sm:$0xff]
    %v659 = vld [vmem:[%s1 + $0x13d0] sm:$0xff]
    %v660 = vld [vmem:[%s1 + $0x13d8] sm:$0xff]
    %v661 = vld [vmem:[%s1 + $0x13e0] sm:$0xff]
    %v662 = vld [vmem:[%s1 + $0x13e8] sm:$0xff]
    %v663 = vld [vmem:[%s1 + $0x13f0] sm:$0xff]
    %v664 = vld [vmem:[%s1 + $0x13f8] sm:$0xff]
    %v665 = vld [vmem:[%s1 + $0x1400] sm:$0xff]
    %v666 = vld [vmem:[%s1 + $0x1408] sm:$0xff]
    %v667 = vld [vmem:[%s1 + $0x1410] sm:$0xff]
    %v668 = vld [vmem:[%s1 + $0x1418] sm:$0xff]
    %v669 = vld [vmem:[%s1 + $0x1420] sm:$0xff]
    %v670 = vld [vmem:[%s1 + $0x1428] sm:$0xff]
    %v671 = vld [vmem:[%s1 + $0x1430] sm:$0xff]
    %v672 = vld [vmem:[%s1 + $0x1438] sm:$0xff]
    %v673 = vld [vmem:[%s1 + $0x1440] sm:$0xff]
    %v674 = vld [vmem:[%s1 + $0x1448] sm:$0xff]
    %v675 = vld [vmem:[%s1 + $0x1450] sm:$0xff]
    %v676 = vld [vmem:[%s1 + $0x1458] sm:$0xff]
    %v677 = vld [vmem:[%s1 + $0x1460] sm:$0xff]
    %v678 = vld [vmem:[%s1 + $0x1468] sm:$0xff]
    %v679 = vld [vmem:[%s1 + $0x1470] sm:$0xff]
    %v680 = vld [vmem:[%s1 + $0x1478] sm:$0xff]
    %v681 = vld [vmem:[%s1 + $0x1480] sm:$0xff]
    %v682 = vld [vmem:[%s1 + $0x1488] sm:$0xff]
    %v683 = vld [vmem:[%s1 + $0x1490] sm:$0xff]
    %v684 = vld [vmem:[%s1 + $0x1498] sm:$0xff]
    %v685 = vld [vmem:[%s1 + $0x14a0] sm:$0xff]
    %v686 = vld [vmem:[%s1 + $0x14a8] sm:$0xff]
    %v687 = vld [vmem:[%s1 + $0x14b0] sm:$0xff]
    %v688 = vld [vmem:[%s1 + $0x14b8] sm:$0xff]
    %v689 = vld [vmem:[%s1 + $0x14c0] sm:$0xff]
    %v690 = vld [vmem:[%s1 + $0x14c8] sm:$0xff]
    %v691 = vld [vmem:[%s1 + $0x14d0] sm:$0xff]
    %v692 = vld [vmem:[%s1 + $0x14d8] sm:$0xff]
    %v693 = vld [vmem:[%s1 + $0x14e0] sm:$0xff]
    %v694 = vld [vmem:[%s1 + $0x14e8] sm:$0xff]
    %v695 = vld [vmem:[%s1 + $0x14f0] sm:$0xff]
    %v696 = vld [vmem:[%s1 + $0x14f8] sm:$0xff]
    %v697 = vld [vmem:[%s1 + $0x1500] sm:$0xff]
    %v698 = vld [vmem:[%s1 + $0x1508] sm:$0xff]
    %v699 = vld [vmem:[%s1 + $0x1510] sm:$0xff]
    %v700 = vld [vmem:[%s1 + $0x1518] sm:$0xff]
    %v701 = vld [vmem:[%s1 + $0x1520] sm:$0xff]
    %v702 = vld [vmem:[%s1 + $0x1528] sm:$0xff]
    %v703 = vld [vmem:[%s1 + $0x1530] sm:$0xff]
    %v704 = vld [vmem:[%s1 + $0x1538] sm:$0xff]
    %v705 = vld [vmem:[%s1 + $0x1540] sm:$0xff]
    %v706 = vld [vmem:[%s1 + $0x1548] sm:$0xff]
    %v707 = vld [vmem:[%s1 + $0x1550] sm:$0xff]
    %v708 = vld [vmem:[%s1 + $0x1558] sm:$0xff]
    %v709 = vld [vmem:[%s1 + $0x1560] sm:$0xff]
    %v710 = vld [vmem:[%s1 + $0x1568] sm:$0xff]
    %v711 = vld [vmem:[%s1 + $0x1570] sm:$0xff]
    %v712 = vld [vmem:[%s1 + $0x1578] sm:$0xff]
    %v713 = vld [vmem:[%s1 + $0x1580] sm:$0xff]
    %v714 = vld [vmem:[%s1 + $0x1588] sm:$0xff]
    %v715 = vld [vmem:[%s1 + $0x1590] sm:$0xff]
    %v716 = vld [vmem:[%s1 + $0x1598] sm:$0xff]
    %v717 = vld [vmem:[%s1 + $0x15a0] sm:$0xff]
    %v718 = vld [vmem:[%s1 + $0x15a8] sm:$0xff]
    %v719 = vld [vmem:[%s1 + $0x15b0] sm:$0xff]
    %v720 = vld [vmem:[%s1 + $0x15b8] sm:$0xff]
    %v721 = vld [vmem:[%s1 + $0x15c0] sm:$0xff]
    %v722 = vld [vmem:[%s1 + $0x15c8] sm:$0xff]
    %v723 = vld [vmem:[%s1 + $0x15d0] sm:$0xff]
    %v724 = vld [vmem:[%s1 + $0x15d8] sm:$0xff]
    %v725 = vld [vmem:[%s1 + $0x15e0] sm:$0xff]
    %v726 = vld [vmem:[%s1 + $0x15e8] sm:$0xff]
    %v727 = vld [vmem:[%s1 + $0x15f0] sm:$0xff]
    %v728 = vld [vmem:[%s1 + $0x15f8] sm:$0xff]
    %v729 = vld [vmem:[%s1 + $0x1600] sm:$0xff]
    %v730 = vld [vmem:[%s1 + $0x1608] sm:$0xff]
    %v731 = vld [vmem:[%s1 + $0x1610] sm:$0xff]
    %v732 = vld [vmem:[%s1 + $0x1618] sm:$0xff]
    %v733 = vld [vmem:[%s1 + $0x1620] sm:$0xff]
    %v734 = vld [vmem:[%s1 + $0x1628] sm:$0xff]
    %v735 = vld [vmem:[%s1 + $0x1630] sm:$0xff]
    %v736 = vld [vmem:[%s1 + $0x1638] sm:$0xff]
    %v737 = vld [vmem:[%s1 + $0x1640] sm:$0xff]
    %v738 = vld [vmem:[%s1 + $0x1648] sm:$0xff]
    %v739 = vld [vmem:[%s1 + $0x1650] sm:$0xff]
    %v740 = vld [vmem:[%s1 + $0x1658] sm:$0xff]
    %v741 = vld [vmem:[%s1 + $0x1660] sm:$0xff]
    %v742 = vld [vmem:[%s1 + $0x1668] sm:$0xff]
    %v743 = vld [vmem:[%s1 + $0x1670] sm:$0xff]
    %v744 = vld [vmem:[%s1 + $0x1678] sm:$0xff]
    %v745 = vld [vmem:[%s1 + $0x1680] sm:$0xff]
    %v746 = vld [vmem:[%s1 + $0x1688] sm:$0xff]
    %v747 = vld [vmem:[%s1 + $0x1690] sm:$0xff]
    %v748 = vld [vmem:[%s1 + $0x1698] sm:$0xff]
    %v749 = vld [vmem:[%s1 + $0x16a0] sm:$0xff]
    %v750 = vld [vmem:[%s1 + $0x16a8] sm:$0xff]
    %v751 = vld [vmem:[%s1 + $0x16b0] sm:$0xff]
    %v752 = vld [vmem:[%s1 + $0x16b8] sm:$0xff]
    %v753 = vld [vmem:[%s1 + $0x16c0] sm:$0xff]
    %v754 = vld [vmem:[%s1 + $0x16c8] sm:$0xff]
    %v755 = vld [vmem:[%s1 + $0x16d0] sm:$0xff]
    %v756 = vld [vmem:[%s1 + $0x16d8] sm:$0xff]
    %v757 = vld [vmem:[%s1 + $0x16e0] sm:$0xff]
    %v758 = vld [vmem:[%s1 + $0x16e8] sm:$0xff]
    %v759 = vld [vmem:[%s1 + $0x16f0] sm:$0xff]
    %v760 = vld [vmem:[%s1 + $0x16f8] sm:$0xff]
    %v761 = vld [vmem:[%s1 + $0x1700] sm:$0xff]
    %v762 = vld [vmem:[%s1 + $0x1708] sm:$0xff]
    %v763 = vld [vmem:[%s1 + $0x1710] sm:$0xff]
    %v764 = vld [vmem:[%s1 + $0x1718] sm:$0xff]
    %v765 = vld [vmem:[%s1 + $0x1720] sm:$0xff]
    %v766 = vld [vmem:[%s1 + $0x1728] sm:$0xff]
    %v767 = vld [vmem:[%s1 + $0x1730] sm:$0xff]
    %v768 = vld [vmem:[%s1 + $0x1738] sm:$0xff]
    %v769 = vld [vmem:[%s1 + $0x1740] sm:$0xff]
    %v770 = vld [vmem:[%s1 + $0x1748] sm:$0xff]
    %v771 = vld [vmem:[%s1 + $0x1750] sm:$0xff]
    %v772 = vld [vmem:[%s1 + $0x1758] sm:$0xff]
    %v773 = vld [vmem:[%s1 + $0x1760] sm:$0xff]
    %v774 = vld [vmem:[%s1 + $0x1768] sm:$0xff]
    %v775 = vld [vmem:[%s1 + $0x1770] sm:$0xff]
    %v776 = vld [vmem:[%s1 + $0x1778] sm:$0xff]
    %v777 = vld [vmem:[%s1 + $0x1780] sm:$0xff]
    %v778 = vld [vmem:[%s1 + $0x1788] sm:$0xff]
    %v779 = vld [vmem:[%s1 + $0x1790] sm:$0xff]
    %v780 = vld [vmem:[%s1 + $0x1798] sm:$0xff]
    %v781 = vld [vmem:[%s1 + $0x17a0] sm:$0xff]
    %v782 = vld [vmem:[%s1 + $0x17a8] sm:$0xff]
    %v783 = vld [vmem:[%s1 + $0x17b0] sm:$0xff]
    %v784 = vld [vmem:[%s1 + $0x17b8] sm:$0xff]
    %v785 = vld [vmem:[%s1 + $0x17c0] sm:$0xff]
    %v786 = vld [vmem:[%s1 + $0x17c8] sm:$0xff]
    %v787 = vld [vmem:[%s1 + $0x17d0] sm:$0xff]
    %v788 = vld [vmem:[%s1 + $0x17d8] sm:$0xff]
    %v789 = vld [vmem:[%s1 + $0x17e0] sm:$0xff]
    %v790 = vld [vmem:[%s1 + $0x17e8] sm:$0xff]
    %v791 = vld [vmem:[%s1 + $0x17f0] sm:$0xff]
    %v792 = vld [vmem:[%s1 + $0x17f8] sm:$0xff]
    %v793 = vld [vmem:[%s1 + $0x1800] sm:$0xff]
    %v794 = vld [vmem:[%s1 + $0x1808] sm:$0xff]
    %v795 = vld [vmem:[%s1 + $0x1810] sm:$0xff]
    %v796 = vld [vmem:[%s1 + $0x1818] sm:$0xff]
    %v797 = vld [vmem:[%s1 + $0x1820] sm:$0xff]
    %v798 = vld [vmem:[%s1 + $0x1828] sm:$0xff]
    %v799 = vld [vmem:[%s1 + $0x1830] sm:$0xff]
    %v800 = vld [vmem:[%s1 + $0x1838] sm:$0xff]
    %v801 = vld [vmem:[%s1 + $0x1840] sm:$0xff]
    %v802 = vld [vmem:[%s1 + $0x1848] sm:$0xff]
    %v803 = vld [vmem:[%s1 + $0x1850] sm:$0xff]
    %v804 = vld [vmem:[%s1 + $0x1858] sm:$0xff]
    %v805 = vld [vmem:[%s1 + $0x1860] sm:$0xff]
    %v806 = vld [vmem:[%s1 + $0x1868] sm:$0xff]
    %v807 = vld [vmem:[%s1 + $0x1870] sm:$0xff]
    %v808 = vld [vmem:[%s1 + $0x1878] sm:$0xff]
    %v809 = vld [vmem:[%s1 + $0x1880] sm:$0xff]
    %v810 = vld [vmem:[%s1 + $0x1888] sm:$0xff]
    %v811 = vld [vmem:[%s1 + $0x1890] sm:$0xff]
    %v812 = vld [vmem:[%s1 + $0x1898] sm:$0xff]
    %v813 = vld [vmem:[%s1 + $0x18a0] sm:$0xff]
    %v814 = vld [vmem:[%s1 + $0x18a8] sm:$0xff]
    %v815 = vld [vmem:[%s1 + $0x18b0] sm:$0xff]
    %v816 = vld [vmem:[%s1 + $0x18b8] sm:$0xff]
    %v817 = vld [vmem:[%s1 + $0x18c0] sm:$0xff]
    %v818 = vld [vmem:[%s1 + $0x18c8] sm:$0xff]
    %v819 = vld [vmem:[%s1 + $0x18d0] sm:$0xff]
    %v820 = vld [vmem:[%s1 + $0x18d8] sm:$0xff]
    %v821 = vld [vmem:[%s1 + $0x18e0] sm:$0xff]
    %v822 = vld [vmem:[%s1 + $0x18e8] sm:$0xff]
    %v823 = vld [vmem:[%s1 + $0x18f0] sm:$0xff]
    %v824 = vld [vmem:[%s1 + $0x18f8] sm:$0xff]
    %v825 = vld [vmem:[%s1 + $0x1900] sm:$0xff]
    %v826 = vld [vmem:[%s1 + $0x1908] sm:$0xff]
    %v827 = vld [vmem:[%s1 + $0x1910] sm:$0xff]
    %v828 = vld [vmem:[%s1 + $0x1918] sm:$0xff]
    %v829 = vld [vmem:[%s1 + $0x1920] sm:$0xff]
    %v830 = vld [vmem:[%s1 + $0x1928] sm:$0xff]
    %v831 = vld [vmem:[%s1 + $0x1930] sm:$0xff]
    %v832 = vld [vmem:[%s1 + $0x1938] sm:$0xff]
    %v833 = vld [vmem:[%s1 + $0x1940] sm:$0xff]
    %v834 = vld [vmem:[%s1 + $0x1948] sm:$0xff]
    %v835 = vld [vmem:[%s1 + $0x1950] sm:$0xff]
    %v836 = vld [vmem:[%s1 + $0x1958] sm:$0xff]
    %v837 = vld [vmem:[%s1 + $0x1960] sm:$0xff]
    %v838 = vld [vmem:[%s1 + $0x1968] sm:$0xff]
    %v839 = vld [vmem:[%s1 + $0x1970] sm:$0xff]
    %v840 = vld [vmem:[%s1 + $0x1978] sm:$0xff]
    %v841 = vld [vmem:[%s1 + $0x1980] sm:$0xff]
    %v842 = vld [vmem:[%s1 + $0x1988] sm:$0xff]
    %v843 = vld [vmem:[%s1 + $0x1990] sm:$0xff]
    %v844 = vld [vmem:[%s1 + $0x1998] sm:$0xff]
    %v845 = vld [vmem:[%s1 + $0x19a0] sm:$0xff]
    %v846 = vld [vmem:[%s1 + $0x19a8] sm:$0xff]
    %v847 = vld [vmem:[%s1 + $0x19b0] sm:$0xff]
    %v848 = vld [vmem:[%s1 + $0x19b8] sm:$0xff]
    %v849 = vld [vmem:[%s1 + $0x19c0] sm:$0xff]
    %v850 = vld [vmem:[%s1 + $0x19c8] sm:$0xff]
    %v851 = vld [vmem:[%s1 + $0x19d0] sm:$0xff]
    %v852 = vld [vmem:[%s1 + $0x19d8] sm:$0xff]
    %v853 = vld [vmem:[%s1 + $0x19e0] sm:$0xff]
    %v854 = vld [vmem:[%s1 + $0x19e8] sm:$0xff]
    %v855 = vld [vmem:[%s1 + $0x19f0] sm:$0xff]
    %v856 = vld [vmem:[%s1 + $0x19f8] sm:$0xff]
    %v857 = vld [vmem:[%s1 + $0x1a00] sm:$0xff]
    %v858 = vld [vmem:[%s1 + $0x1a08] sm:$0xff]
    %v859 = vld [vmem:[%s1 + $0x1a10] sm:$0xff]
    %v860 = vld [vmem:[%s1 + $0x1a18] sm:$0xff]
    %v861 = vld [vmem:[%s1 + $0x1a20] sm:$0xff]
    %v862 = vld [vmem:[%s1 + $0x1a28] sm:$0xff]
    %v863 = vld [vmem:[%s1 + $0x1a30] sm:$0xff]
    %v864 = vld [vmem:[%s1 + $0x1a38] sm:$0xff]
    %v865 = vld [vmem:[%s1 + $0x1a40] sm:$0xff]
    %v866 = vld [vmem:[%s1 + $0x1a48] sm:$0xff]
    %v867 = vld [vmem:[%s1 + $0x1a50] sm:$0xff]
    %v868 = vld [vmem:[%s1 + $0x1a58] sm:$0xff]
    %v869 = vld [vmem:[%s1 + $0x1a60] sm:$0xff]
    %v870 = vld [vmem:[%s1 + $0x1a68] sm:$0xff]
    %v871 = vld [vmem:[%s1 + $0x1a70] sm:$0xff]
    %v872 = vld [vmem:[%s1 + $0x1a78] sm:$0xff]
    %v873 = vld [vmem:[%s1 + $0x1a80] sm:$0xff]
    %v874 = vld [vmem:[%s1 + $0x1a88] sm:$0xff]
    %v875 = vld [vmem:[%s1 + $0x1a90] sm:$0xff]
    %v876 = vld [vmem:[%s1 + $0x1a98] sm:$0xff]
    %v877 = vld [vmem:[%s1 + $0x1aa0] sm:$0xff]
    %v878 = vld [vmem:[%s1 + $0x1aa8] sm:$0xff]
    %v879 = vld [vmem:[%s1 + $0x1ab0] sm:$0xff]
    %v880 = vld [vmem:[%s1 + $0x1ab8] sm:$0xff]
    %v881 = vld [vmem:[%s1 + $0x1ac0] sm:$0xff]
    %v882 = vld [vmem:[%s1 + $0x1ac8] sm:$0xff]
    %v883 = vld [vmem:[%s1 + $0x1ad0] sm:$0xff]
    %v884 = vld [vmem:[%s1 + $0x1ad8] sm:$0xff]
    %v885 = vld [vmem:[%s1 + $0x1ae0] sm:$0xff]
    %v886 = vld [vmem:[%s1 + $0x1ae8] sm:$0xff]
    %v887 = vld [vmem:[%s1 + $0x1af0] sm:$0xff]
    %v888 = vld [vmem:[%s1 + $0x1af8] sm:$0xff]
    %v889 = vld [vmem:[%s1 + $0x1b00] sm:$0xff]
    %v890 = vld [vmem:[%s1 + $0x1b08] sm:$0xff]
    %v891 = vld [vmem:[%s1 + $0x1b10] sm:$0xff]
    %v892 = vld [vmem:[%s1 + $0x1b18] sm:$0xff]
    %v893 = vld [vmem:[%s1 + $0x1b20] sm:$0xff]
    %v894 = vld [vmem:[%s1 + $0x1b28] sm:$0xff]
    %v895 = vld [vmem:[%s1 + $0x1b30] sm:$0xff]
    %v896 = vld [vmem:[%s1 + $0x1b38] sm:$0xff]
    %v897 = vld [vmem:[%s1 + $0x1b40] sm:$0xff]
    %v898 = vld [vmem:[%s1 + $0x1b48] sm:$0xff]
    %v899 = vld [vmem:[%s1 + $0x1b50] sm:$0xff]
    %v900 = vld [vmem:[%s1 + $0x1b58] sm:$0xff]
    %v901 = vld [vmem:[%s1 + $0x1b60] sm:$0xff]
    %v902 = vld [vmem:[%s1 + $0x1b68] sm:$0xff]
    %v903 = vld [vmem:[%s1 + $0x1b70] sm:$0xff]
    %v904 = vld [vmem:[%s1 + $0x1b78] sm:$0xff]
    %v905 = vld [vmem:[%s1 + $0x1b80] sm:$0xff]
    %v906 = vld [vmem:[%s1 + $0x1b88] sm:$0xff]
    %v907 = vld [vmem:[%s1 + $0x1b90] sm:$0xff]
    %v908 = vld [vmem:[%s1 + $0x1b98] sm:$0xff]
    %v909 = vld [vmem:[%s1 + $0x1ba0] sm:$0xff]
    %v910 = vld [vmem:[%s1 + $0x1ba8] sm:$0xff]
    %v911 = vld [vmem:[%s1 + $0x1bb0] sm:$0xff]
    %v912 = vld [vmem:[%s1 + $0x1bb8] sm:$0xff]
    %v913 = vld [vmem:[%s1 + $0x1bc0] sm:$0xff]
    %v914 = vld [vmem:[%s1 + $0x1bc8] sm:$0xff]
    %v915 = vld [vmem:[%s1 + $0x1bd0] sm:$0xff]
    %v916 = vld [vmem:[%s1 + $0x1bd8] sm:$0xff]
    %v917 = vld [vmem:[%s1 + $0x1be0] sm:$0xff]
    %v918 = vld [vmem:[%s1 + $0x1be8] sm:$0xff]
    %v919 = vld [vmem:[%s1 + $0x1bf0] sm:$0xff]
    %v920 = vld [vmem:[%s1 + $0x1bf8] sm:$0xff]
    %v921 = vld [vmem:[%s2] sm:$0xf]
    %v923 = vlaneseq
    %v924 = vshrl.u32 %v923, 7
    %v925 = vsub.s32 0, %v924
    %v926 = vrot.slane %v921, %v925
    %v927 = vlaneseq
    %v928 = vshrl.u32 %v927, 7
    %v929 = vsub.s32 1, %v928
    %v930 = vrot.slane %v921, %v929
    %v931 = vlaneseq
    %v932 = vshrl.u32 %v931, 7
    %v933 = vsub.s32 2, %v932
    %v934 = vrot.slane %v921, %v933
    %v935 = vlaneseq
    %v936 = vshrl.u32 %v935, 7
    %v937 = vsub.s32 3, %v936
    %v938 = vrot.slane %v921, %v937
    %v947 = vcombine.high %v21, %v21
    %v949 = vunpack.c.l.s4 1983009808
    %v950 = vunpack.c.0.s8 %v949
    %v951 = vlaneseq
    %v952 = vshrl.u32 %v951, 7
    %v953 = vsub.s32 %v950, %v952
    %v954 = vrot.slane %v21, %v953
    %v956 = vunpack.c.l.s4 1983009808
    %v957 = vunpack.c.0.s8 %v956
    %v958 = vlaneseq
    %v959 = vshrl.u32 %v958, 7
    %v960 = vsub.s32 %v957, %v959
    %v961 = vrot.slane %v947, %v960
    %v962 = vcombine.high %v954, %v954
    %v963 = vcombine.high %v961, %v961
    %v964 = vcombine.high %v22, %v22
    %v966 = vunpack.c.l.s4 1983009808
    %v967 = vunpack.c.0.s8 %v966
    %v968 = vlaneseq
    %v969 = vshrl.u32 %v968, 7
    %v970 = vsub.s32 %v967, %v969
    %v971 = vrot.slane %v22, %v970
    %v973 = vunpack.c.l.s4 1983009808
    %v974 = vunpack.c.0.s8 %v973
    %v975 = vlaneseq
    %v976 = vshrl.u32 %v975, 7
    %v977 = vsub.s32 %v974, %v976
    %v978 = vrot.slane %v964, %v977
    %v979 = vcombine.high %v971, %v971
    %v980 = vcombine.high %v978, %v978
    %v981 = vcombine.high %v23, %v23
    %v983 = vunpack.c.l.s4 1983009808
    %v984 = vunpack.c.0.s8 %v983
    %v985 = vlaneseq
    %v986 = vshrl.u32 %v985, 7
    %v987 = vsub.s32 %v984, %v986
    %v988 = vrot.slane %v23, %v987
    %v990 = vunpack.c.l.s4 1983009808
    %v991 = vunpack.c.0.s8 %v990
    %v992 = vlaneseq
    %v993 = vshrl.u32 %v992, 7
    %v994 = vsub.s32 %v991, %v993
    %v995 = vrot.slane %v981, %v994
    %v996 = vcombine.high %v988, %v988
    %v997 = vcombine.high %v995, %v995
    %v999 = vunpack.c.l.s4 1983009808
    %v1000 = vunpack.c.0.s8 %v999
    %v1001 = vlaneseq
    %v1002 = vshrl.u32 %v1001, 7
    %v1003 = vsub.s32 %v1000, %v1002
    %v1004 = vrot.slane %v24, %v1003
    %v1005 = vcombine.high %v1004, %v1004
    %1020 = vmatprep.subr.mxu0 %v26
    %1021 = vmatpush1.msra.mxu0 %v25
    %1022 = vmatprep.subr.mxu0 %v30
    %1023 = vmatpush1.msra.mxu0 %v29
    %1024 = vmatprep.subr.mxu0 %v34
    %1025 = vmatpush1.msra.mxu0 %v33
    %1026 = vmatprep.subr.mxu0 %v38
    %1027 = vmatpush1.msra.mxu0 %v37
    %1028 = vmatprep.subr.mxu0 %v42
    %1029 = vmatpush1.msra.mxu0 %v41
    %1030 = vmatprep.subr.mxu0 %v46
    %1031 = vmatpush1.msra.mxu0 %v45
    %1032 = vmatprep.subr.mxu0 %v50
    %1033 = vmatpush1.msra.mxu0 %v49
    %1034 = vmatprep.subr.mxu0 %v54
    %1035 = vmatpush1.msra.mxu0 %v53
    %1036 = vmatprep.subr.mxu0 %v58
    %1037 = vmatpush1.msra.mxu0 %v57
    %1038 = vmatprep.subr.mxu0 %v62
    %1039 = vmatpush1.msra.mxu0 %v61
    %1040 = vmatprep.subr.mxu0 %v66
    %1041 = vmatpush1.msra.mxu0 %v65
    %1042 = vmatprep.subr.mxu0 %v70
    %1043 = vmatpush1.msra.mxu0 %v69
    %1044 = vmatprep.subr.mxu0 %v74
    %1045 = vmatpush1.msra.mxu0 %v73
    %1046 = vmatprep.subr.mxu0 %v78
    %1047 = vmatpush1.msra.mxu0 %v77
    %1048 = vmatprep.subr.mxu0 %v82
    %1049 = vmatpush1.msra.mxu0 %v81
    %1050 = vmatprep.subr.mxu0 %v86
    %1051 = vmatpush1.msra.mxu0 %v85
    %1052 = vmatprep.subr.mxu0 %v90
    %1053 = vmatpush1.msra.mxu0 %v89
    %1054 = vmatprep.subr.mxu0 %v94
    %1055 = vmatpush1.msra.mxu0 %v93
    %1056 = vmatprep.subr.mxu0 %v98
    %1057 = vmatpush1.msra.mxu0 %v97
    %1058 = vmatprep.subr.mxu0 %v102
    %1059 = vmatpush1.msra.mxu0 %v101
    %1060 = vmatprep.subr.mxu0 %v106
    %1061 = vmatpush1.msra.mxu0 %v105
    %1062 = vmatprep.subr.mxu0 %v110
    %1063 = vmatpush1.msra.mxu0 %v109
    %1064 = vmatprep.subr.mxu0 %v114
    %1065 = vmatpush1.msra.mxu0 %v113
    %1066 = vmatprep.subr.mxu0 %v118
    %1067 = vmatpush1.msra.mxu0 %v117
    %1068 = vmatprep.subr.mxu0 %v122
    %1069 = vmatpush1.msra.mxu0 %v121
    %1070 = vmatprep.subr.mxu0 %v126
    %1071 = vmatpush1.msra.mxu0 %v125
    %1072 = vmatprep.subr.mxu0 %v130
    %1073 = vmatpush1.msra.mxu0 %v129
    %1074 = vmatprep.subr.mxu0 %v134
    %1075 = vmatpush1.msra.mxu0 %v133
    %1076 = vmatprep.subr.mxu0 %v138
    %1077 = vmatpush1.msra.mxu0 %v137
    %1078 = vmatprep.subr.mxu0 %v142
    %1079 = vmatpush1.msra.mxu0 %v141
    %1080 = vmatprep.subr.mxu0 %v146
    %1081 = vmatpush1.msra.mxu0 %v145
    %1082 = vmatprep.subr.mxu0 %v150
    %1083 = vmatpush1.msra.mxu0 %v149
    %1084 = vmatprep.mubr.f32.mxu0 %v962
    %1085 = vmatmul.mubr.f32.gmra.mrb[0].mxu0 %v954
    %v1086 = vpop.f32.mrb[0].mxu0
    %v1087 = vadd.f32 %v926, %v1086
    %v1088 = vpop.f32.mrb[0].mxu0
    %v1089 = vadd.f32 %v930, %v1088
    %1090 = vdwg.mxu0
    %1091 = vmatprep.subr.mxu0 %v154
    %1092 = vmatpush1.msra.mxu0 %v153
    %1093 = vmatprep.subr.mxu0 %v158
    %1094 = vmatpush1.msra.mxu0 %v157
    %1095 = vmatprep.subr.mxu0 %v162
    %1096 = vmatpush1.msra.mxu0 %v161
    %1097 = vmatprep.subr.mxu0 %v166
    %1098 = vmatpush1.msra.mxu0 %v165
    %1099 = vmatprep.subr.mxu0 %v170
    %1100 = vmatpush1.msra.mxu0 %v169
    %1101 = vmatprep.subr.mxu0 %v174
    %1102 = vmatpush1.msra.mxu0 %v173
    %1103 = vmatprep.subr.mxu0 %v178
    %1104 = vmatpush1.msra.mxu0 %v177
    %1105 = vmatprep.subr.mxu0 %v182
    %1106 = vmatpush1.msra.mxu0 %v181
    %1107 = vmatprep.subr.mxu0 %v186
    %1108 = vmatpush1.msra.mxu0 %v185
    %1109 = vmatprep.subr.mxu0 %v190
    %1110 = vmatpush1.msra.mxu0 %v189
    %1111 = vmatprep.subr.mxu0 %v194
    %1112 = vmatpush1.msra.mxu0 %v193
    %1113 = vmatprep.subr.mxu0 %v198
    %1114 = vmatpush1.msra.mxu0 %v197
    %1115 = vmatprep.subr.mxu0 %v202
    %1116 = vmatpush1.msra.mxu0 %v201
    %1117 = vmatprep.subr.mxu0 %v206
    %1118 = vmatpush1.msra.mxu0 %v205
    %1119 = vmatprep.subr.mxu0 %v210
    %1120 = vmatpush1.msra.mxu0 %v209
    %1121 = vmatprep.subr.mxu0 %v214
    %1122 = vmatpush1.msra.mxu0 %v213
    %1123 = vmatprep.subr.mxu0 %v218
    %1124 = vmatpush1.msra.mxu0 %v217
    %1125 = vmatprep.subr.mxu0 %v222
    %1126 = vmatpush1.msra.mxu0 %v221
    %1127 = vmatprep.subr.mxu0 %v226
    %1128 = vmatpush1.msra.mxu0 %v225
    %1129 = vmatprep.subr.mxu0 %v230
    %1130 = vmatpush1.msra.mxu0 %v229
    %1131 = vmatprep.subr.mxu0 %v234
    %1132 = vmatpush1.msra.mxu0 %v233
    %1133 = vmatprep.subr.mxu0 %v238
    %1134 = vmatpush1.msra.mxu0 %v237
    %1135 = vmatprep.subr.mxu0 %v242
    %1136 = vmatpush1.msra.mxu0 %v241
    %1137 = vmatprep.subr.mxu0 %v246
    %1138 = vmatpush1.msra.mxu0 %v245
    %1139 = vmatprep.subr.mxu0 %v250
    %1140 = vmatpush1.msra.mxu0 %v249
    %1141 = vmatprep.subr.mxu0 %v254
    %1142 = vmatpush1.msra.mxu0 %v253
    %1143 = vmatprep.subr.mxu0 %v258
    %1144 = vmatpush1.msra.mxu0 %v257
    %1145 = vmatprep.subr.mxu0 %v262
    %1146 = vmatpush1.msra.mxu0 %v261
    %1147 = vmatprep.subr.mxu0 %v266
    %1148 = vmatpush1.msra.mxu0 %v265
    %1149 = vmatprep.subr.mxu0 %v270
    %1150 = vmatpush1.msra.mxu0 %v269
    %1151 = vmatprep.subr.mxu0 %v274
    %1152 = vmatpush1.msra.mxu0 %v273
    %1153 = vmatprep.subr.mxu0 %v278
    %1154 = vmatpush1.msra.mxu0 %v277
    %1155 = vmatprep.mubr.f32.mxu0 %v963
    %1156 = vmatmul.mubr.f32.gmra.mrb[0].mxu0 %v961
    %v1157 = vpop.f32.mrb[0].mxu0
    %v1158 = vadd.f32 %v1087, %v1157
    %v1159 = vpop.f32.mrb[0].mxu0
    %v1160 = vadd.f32 %v1089, %v1159
    %1161 = vdwg.mxu0
    %1162 = vmatprep.subr.mxu0 %v282
    %1163 = vmatpush1.msra.mxu0 %v281
    %1164 = vmatprep.subr.mxu0 %v286
    %1165 = vmatpush1.msra.mxu0 %v285
    %1166 = vmatprep.subr.mxu0 %v290
    %1167 = vmatpush1.msra.mxu0 %v289
    %1168 = vmatprep.subr.mxu0 %v294
    %1169 = vmatpush1.msra.mxu0 %v293
    %1170 = vmatprep.subr.mxu0 %v298
    %1171 = vmatpush1.msra.mxu0 %v297
    %1172 = vmatprep.subr.mxu0 %v302
    %1173 = vmatpush1.msra.mxu0 %v301
    %1174 = vmatprep.subr.mxu0 %v306
    %1175 = vmatpush1.msra.mxu0 %v305
    %1176 = vmatprep.subr.mxu0 %v310
    %1177 = vmatpush1.msra.mxu0 %v309
    %1178 = vmatprep.subr.mxu0 %v314
    %1179 = vmatpush1.msra.mxu0 %v313
    %1180 = vmatprep.subr.mxu0 %v318
    %1181 = vmatpush1.msra.mxu0 %v317
    %1182 = vmatprep.subr.mxu0 %v322
    %1183 = vmatpush1.msra.mxu0 %v321
    %1184 = vmatprep.subr.mxu0 %v326
    %1185 = vmatpush1.msra.mxu0 %v325
    %1186 = vmatprep.subr.mxu0 %v330
    %1187 = vmatpush1.msra.mxu0 %v329
    %1188 = vmatprep.subr.mxu0 %v334
    %1189 = vmatpush1.msra.mxu0 %v333
    %1190 = vmatprep.subr.mxu0 %v338
    %1191 = vmatpush1.msra.mxu0 %v337
    %1192 = vmatprep.subr.mxu0 %v342
    %1193 = vmatpush1.msra.mxu0 %v341
    %1194 = vmatprep.subr.mxu0 %v346
    %1195 = vmatpush1.msra.mxu0 %v345
    %1196 = vmatprep.subr.mxu0 %v350
    %1197 = vmatpush1.msra.mxu0 %v349
    %1198 = vmatprep.subr.mxu0 %v354
    %1199 = vmatpush1.msra.mxu0 %v353
    %1200 = vmatprep.subr.mxu0 %v358
    %1201 = vmatpush1.msra.mxu0 %v357
    %1202 = vmatprep.subr.mxu0 %v362
    %1203 = vmatpush1.msra.mxu0 %v361
    %1204 = vmatprep.subr.mxu0 %v366
    %1205 = vmatpush1.msra.mxu0 %v365
    %1206 = vmatprep.subr.mxu0 %v370
    %1207 = vmatpush1.msra.mxu0 %v369
    %1208 = vmatprep.subr.mxu0 %v374
    %1209 = vmatpush1.msra.mxu0 %v373
    %1210 = vmatprep.subr.mxu0 %v378
    %1211 = vmatpush1.msra.mxu0 %v377
    %1212 = vmatprep.subr.mxu0 %v382
    %1213 = vmatpush1.msra.mxu0 %v381
    %1214 = vmatprep.subr.mxu0 %v386
    %1215 = vmatpush1.msra.mxu0 %v385
    %1216 = vmatprep.subr.mxu0 %v390
    %1217 = vmatpush1.msra.mxu0 %v389
    %1218 = vmatprep.subr.mxu0 %v394
    %1219 = vmatpush1.msra.mxu0 %v393
    %1220 = vmatprep.subr.mxu0 %v398
    %1221 = vmatpush1.msra.mxu0 %v397
    %1222 = vmatprep.subr.mxu0 %v402
    %1223 = vmatpush1.msra.mxu0 %v401
    %1224 = vmatprep.subr.mxu0 %v406
    %1225 = vmatpush1.msra.mxu0 %v405
    %1226 = vmatprep.mubr.f32.mxu0 %v979
    %1227 = vmatmul.mubr.f32.gmra.mrb[0].mxu0 %v971
    %v1228 = vpop.f32.mrb[0].mxu0
    %v1229 = vadd.f32 %v1158, %v1228
    %v1230 = vpop.f32.mrb[0].mxu0
    %v1231 = vadd.f32 %v1160, %v1230
    %1232 = vdwg.mxu0
    %1233 = vmatprep.subr.mxu0 %v410
    %1234 = vmatpush1.msra.mxu0 %v409
    %1235 = vmatprep.subr.mxu0 %v414
    %1236 = vmatpush1.msra.mxu0 %v413
    %1237 = vmatprep.subr.mxu0 %v418
    %1238 = vmatpush1.msra.mxu0 %v417
    %1239 = vmatprep.subr.mxu0 %v422
    %1240 = vmatpush1.msra.mxu0 %v421
    %1241 = vmatprep.subr.mxu0 %v426
    %1242 = vmatpush1.msra.mxu0 %v425
    %1243 = vmatprep.subr.mxu0 %v430
    %1244 = vmatpush1.msra.mxu0 %v429
    %1245 = vmatprep.subr.mxu0 %v434
    %1246 = vmatpush1.msra.mxu0 %v433
    %1247 = vmatprep.subr.mxu0 %v438
    %1248 = vmatpush1.msra.mxu0 %v437
    %1249 = vmatprep.subr.mxu0 %v442
    %1250 = vmatpush1.msra.mxu0 %v441
    %1251 = vmatprep.subr.mxu0 %v446
    %1252 = vmatpush1.msra.mxu0 %v445
    %1253 = vmatprep.subr.mxu0 %v450
    %1254 = vmatpush1.msra.mxu0 %v449
    %1255 = vmatprep.subr.mxu0 %v454
    %1256 = vmatpush1.msra.mxu0 %v453
    %1257 = vmatprep.subr.mxu0 %v458
    %1258 = vmatpush1.msra.mxu0 %v457
    %1259 = vmatprep.subr.mxu0 %v462
    %1260 = vmatpush1.msra.mxu0 %v461
    %1261 = vmatprep.subr.mxu0 %v466
    %1262 = vmatpush1.msra.mxu0 %v465
    %1263 = vmatprep.subr.mxu0 %v470
    %1264 = vmatpush1.msra.mxu0 %v469
    %1265 = vmatprep.subr.mxu0 %v474
    %1266 = vmatpush1.msra.mxu0 %v473
    %1267 = vmatprep.subr.mxu0 %v478
    %1268 = vmatpush1.msra.mxu0 %v477
    %1269 = vmatprep.subr.mxu0 %v482
    %1270 = vmatpush1.msra.mxu0 %v481
    %1271 = vmatprep.subr.mxu0 %v486
    %1272 = vmatpush1.msra.mxu0 %v485
    %1273 = vmatprep.subr.mxu0 %v490
    %1274 = vmatpush1.msra.mxu0 %v489
    %1275 = vmatprep.subr.mxu0 %v494
    %1276 = vmatpush1.msra.mxu0 %v493
    %1277 = vmatprep.subr.mxu0 %v498
    %1278 = vmatpush1.msra.mxu0 %v497
    %1279 = vmatprep.subr.mxu0 %v502
    %1280 = vmatpush1.msra.mxu0 %v501
    %1281 = vmatprep.subr.mxu0 %v506
    %1282 = vmatpush1.msra.mxu0 %v505
    %1283 = vmatprep.subr.mxu0 %v510
    %1284 = vmatpush1.msra.mxu0 %v509
    %1285 = vmatprep.subr.mxu0 %v514
    %1286 = vmatpush1.msra.mxu0 %v513
    %1287 = vmatprep.subr.mxu0 %v518
    %1288 = vmatpush1.msra.mxu0 %v517
    %1289 = vmatprep.subr.mxu0 %v522
    %1290 = vmatpush1.msra.mxu0 %v521
    %1291 = vmatprep.subr.mxu0 %v526
    %1292 = vmatpush1.msra.mxu0 %v525
    %1293 = vmatprep.subr.mxu0 %v530
    %1294 = vmatpush1.msra.mxu0 %v529
    %1295 = vmatprep.subr.mxu0 %v534
    %1296 = vmatpush1.msra.mxu0 %v533
    %1297 = vmatprep.mubr.f32.mxu0 %v980
    %1298 = vmatmul.mubr.f32.gmra.mrb[0].mxu0 %v978
    %v1299 = vpop.f32.mrb[0].mxu0
    %v1300 = vadd.f32 %v1229, %v1299
    %v1301 = vpop.f32.mrb[0].mxu0
    %v1302 = vadd.f32 %v1231, %v1301
    %1303 = vdwg.mxu0
    %1304 = vmatprep.subr.mxu0 %v538
    %1305 = vmatpush1.msra.mxu0 %v537
    %1306 = vmatprep.subr.mxu0 %v542
    %1307 = vmatpush1.msra.mxu0 %v541
    %1308 = vmatprep.subr.mxu0 %v546
    %1309 = vmatpush1.msra.mxu0 %v545
    %1310 = vmatprep.subr.mxu0 %v550
    %1311 = vmatpush1.msra.mxu0 %v549
    %1312 = vmatprep.subr.mxu0 %v554
    %1313 = vmatpush1.msra.mxu0 %v553
    %1314 = vmatprep.subr.mxu0 %v558
    %1315 = vmatpush1.msra.mxu0 %v557
    %1316 = vmatprep.subr.mxu0 %v562
    %1317 = vmatpush1.msra.mxu0 %v561
    %1318 = vmatprep.subr.mxu0 %v566
    %1319 = vmatpush1.msra.mxu0 %v565
    %1320 = vmatprep.subr.mxu0 %v570
    %1321 = vmatpush1.msra.mxu0 %v569
    %1322 = vmatprep.subr.mxu0 %v574
    %1323 = vmatpush1.msra.mxu0 %v573
    %1324 = vmatprep.subr.mxu0 %v578
    %1325 = vmatpush1.msra.mxu0 %v577
    %1326 = vmatprep.subr.mxu0 %v582
    %1327 = vmatpush1.msra.mxu0 %v581
    %1328 = vmatprep.subr.mxu0 %v586
    %1329 = vmatpush1.msra.mxu0 %v585
    %1330 = vmatprep.subr.mxu0 %v590
    %1331 = vmatpush1.msra.mxu0 %v589
    %1332 = vmatprep.subr.mxu0 %v594
    %1333 = vmatpush1.msra.mxu0 %v593
    %1334 = vmatprep.subr.mxu0 %v598
    %1335 = vmatpush1.msra.mxu0 %v597
    %1336 = vmatprep.subr.mxu0 %v602
    %1337 = vmatpush1.msra.mxu0 %v601
    %1338 = vmatprep.subr.mxu0 %v606
    %1339 = vmatpush1.msra.mxu0 %v605
    %1340 = vmatprep.subr.mxu0 %v610
    %1341 = vmatpush1.msra.mxu0 %v609
    %1342 = vmatprep.subr.mxu0 %v614
    %1343 = vmatpush1.msra.mxu0 %v613
    %1344 = vmatprep.subr.mxu0 %v618
    %1345 = vmatpush1.msra.mxu0 %v617
    %1346 = vmatprep.subr.mxu0 %v622
    %1347 = vmatpush1.msra.mxu0 %v621
    %1348 = vmatprep.subr.mxu0 %v626
    %1349 = vmatpush1.msra.mxu0 %v625
    %1350 = vmatprep.subr.mxu0 %v630
    %1351 = vmatpush1.msra.mxu0 %v629
    %1352 = vmatprep.subr.mxu0 %v634
    %1353 = vmatpush1.msra.mxu0 %v633
    %1354 = vmatprep.subr.mxu0 %v638
    %1355 = vmatpush1.msra.mxu0 %v637
    %1356 = vmatprep.subr.mxu0 %v642
    %1357 = vmatpush1.msra.mxu0 %v641
    %1358 = vmatprep.subr.mxu0 %v646
    %1359 = vmatpush1.msra.mxu0 %v645
    %1360 = vmatprep.subr.mxu0 %v650
    %1361 = vmatpush1.msra.mxu0 %v649
    %1362 = vmatprep.subr.mxu0 %v654
    %1363 = vmatpush1.msra.mxu0 %v653
    %1364 = vmatprep.subr.mxu0 %v658
    %1365 = vmatpush1.msra.mxu0 %v657
    %1366 = vmatprep.subr.mxu0 %v662
    %1367 = vmatpush1.msra.mxu0 %v661
    %1368 = vmatprep.mubr.f32.mxu0 %v996
    %1369 = vmatmul.mubr.f32.gmra.mrb[0].mxu0 %v988
    %v1370 = vpop.f32.mrb[0].mxu0
    %v1371 = vadd.f32 %v1300, %v1370
    %v1372 = vpop.f32.mrb[0].mxu0
    %v1373 = vadd.f32 %v1302, %v1372
    %1374 = vdwg.mxu0
    %1375 = vmatprep.subr.mxu0 %v666
    %1376 = vmatpush1.msra.mxu0 %v665
    %1377 = vmatprep.subr.mxu0 %v670
    %1378 = vmatpush1.msra.mxu0 %v669
    %1379 = vmatprep.subr.mxu0 %v674
    %1380 = vmatpush1.msra.mxu0 %v673
    %1381 = vmatprep.subr.mxu0 %v678
    %1382 = vmatpush1.msra.mxu0 %v677
    %1383 = vmatprep.subr.mxu0 %v682
    %1384 = vmatpush1.msra.mxu0 %v681
    %1385 = vmatprep.subr.mxu0 %v686
    %1386 = vmatpush1.msra.mxu0 %v685
    %1387 = vmatprep.subr.mxu0 %v690
    %1388 = vmatpush1.msra.mxu0 %v689
    %1389 = vmatprep.subr.mxu0 %v694
    %1390 = vmatpush1.msra.mxu0 %v693
    %1391 = vmatprep.subr.mxu0 %v698
    %1392 = vmatpush1.msra.mxu0 %v697
    %1393 = vmatprep.subr.mxu0 %v702
    %1394 = vmatpush1.msra.mxu0 %v701
    %1395 = vmatprep.subr.mxu0 %v706
    %1396 = vmatpush1.msra.mxu0 %v705
    %1397 = vmatprep.subr.mxu0 %v710
    %1398 = vmatpush1.msra.mxu0 %v709
    %1399 = vmatprep.subr.mxu0 %v714
    %1400 = vmatpush1.msra.mxu0 %v713
    %1401 = vmatprep.subr.mxu0 %v718
    %1402 = vmatpush1.msra.mxu0 %v717
    %1403 = vmatprep.subr.mxu0 %v722
    %1404 = vmatpush1.msra.mxu0 %v721
    %1405 = vmatprep.subr.mxu0 %v726
    %1406 = vmatpush1.msra.mxu0 %v725
    %1407 = vmatprep.subr.mxu0 %v730
    %1408 = vmatpush1.msra.mxu0 %v729
    %1409 = vmatprep.subr.mxu0 %v734
    %1410 = vmatpush1.msra.mxu0 %v733
    %1411 = vmatprep.subr.mxu0 %v738
    %1412 = vmatpush1.msra.mxu0 %v737
    %1413 = vmatprep.subr.mxu0 %v742
    %1414 = vmatpush1.msra.mxu0 %v741
    %1415 = vmatprep.subr.mxu0 %v746
    %1416 = vmatpush1.msra.mxu0 %v745
    %1417 = vmatprep.subr.mxu0 %v750
    %1418 = vmatpush1.msra.mxu0 %v749
    %1419 = vmatprep.subr.mxu0 %v754
    %1420 = vmatpush1.msra.mxu0 %v753
    %1421 = vmatprep.subr.mxu0 %v758
    %1422 = vmatpush1.msra.mxu0 %v757
    %1423 = vmatprep.subr.mxu0 %v762
    %1424 = vmatpush1.msra.mxu0 %v761
    %1425 = vmatprep.subr.mxu0 %v766
    %1426 = vmatpush1.msra.mxu0 %v765
    %1427 = vmatprep.subr.mxu0 %v770
    %1428 = vmatpush1.msra.mxu0 %v769
    %1429 = vmatprep.subr.mxu0 %v774
    %1430 = vmatpush1.msra.mxu0 %v773
    %1431 = vmatprep.subr.mxu0 %v778
    %1432 = vmatpush1.msra.mxu0 %v777
    %1433 = vmatprep.subr.mxu0 %v782
    %1434 = vmatpush1.msra.mxu0 %v781
    %1435 = vmatprep.subr.mxu0 %v786
    %1436 = vmatpush1.msra.mxu0 %v785
    %1437 = vmatprep.subr.mxu0 %v790
    %1438 = vmatpush1.msra.mxu0 %v789
    %1439 = vmatprep.mubr.f32.mxu0 %v997
    %1440 = vmatmul.mubr.f32.gmra.mrb[0].mxu0 %v995
    %v1441 = vpop.f32.mrb[0].mxu0
    %v1442 = vadd.f32 %v1371, %v1441
    %v1443 = vpop.f32.mrb[0].mxu0
    %v1444 = vadd.f32 %v1373, %v1443
    %1445 = vdwg.mxu0
    %1446 = vmatprep.subr.mxu0 %v794
    %1447 = vmatpush1.msra.mxu0 %v793
    %1448 = vmatprep.subr.mxu0 %v798
    %1449 = vmatpush1.msra.mxu0 %v797
    %1450 = vmatprep.subr.mxu0 %v802
    %1451 = vmatpush1.msra.mxu0 %v801
    %1452 = vmatprep.subr.mxu0 %v806
    %1453 = vmatpush1.msra.mxu0 %v805
    %1454 = vmatprep.subr.mxu0 %v810
    %1455 = vmatpush1.msra.mxu0 %v809
    %1456 = vmatprep.subr.mxu0 %v814
    %1457 = vmatpush1.msra.mxu0 %v813
    %1458 = vmatprep.subr.mxu0 %v818
    %1459 = vmatpush1.msra.mxu0 %v817
    %1460 = vmatprep.subr.mxu0 %v822
    %1461 = vmatpush1.msra.mxu0 %v821
    %1462 = vmatprep.subr.mxu0 %v826
    %1463 = vmatpush1.msra.mxu0 %v825
    %1464 = vmatprep.subr.mxu0 %v830
    %1465 = vmatpush1.msra.mxu0 %v829
    %1466 = vmatprep.subr.mxu0 %v834
    %1467 = vmatpush1.msra.mxu0 %v833
    %1468 = vmatprep.subr.mxu0 %v838
    %1469 = vmatpush1.msra.mxu0 %v837
    %1470 = vmatprep.subr.mxu0 %v842
    %1471 = vmatpush1.msra.mxu0 %v841
    %1472 = vmatprep.subr.mxu0 %v846
    %1473 = vmatpush1.msra.mxu0 %v845
    %1474 = vmatprep.subr.mxu0 %v850
    %1475 = vmatpush1.msra.mxu0 %v849
    %1476 = vmatprep.subr.mxu0 %v854
    %1477 = vmatpush1.msra.mxu0 %v853
    %1478 = vmatprep.subr.mxu0 %v858
    %1479 = vmatpush1.msra.mxu0 %v857
    %1480 = vmatprep.subr.mxu0 %v862
    %1481 = vmatpush1.msra.mxu0 %v861
    %1482 = vmatprep.subr.mxu0 %v866
    %1483 = vmatpush1.msra.mxu0 %v865
    %1484 = vmatprep.subr.mxu0 %v870
    %1485 = vmatpush1.msra.mxu0 %v869
    %1486 = vmatprep.subr.mxu0 %v874
    %1487 = vmatpush1.msra.mxu0 %v873
    %1488 = vmatprep.subr.mxu0 %v878
    %1489 = vmatpush1.msra.mxu0 %v877
    %1490 = vmatprep.subr.mxu0 %v882
    %1491 = vmatpush1.msra.mxu0 %v881
    %1492 = vmatprep.subr.mxu0 %v886
    %1493 = vmatpush1.msra.mxu0 %v885
    %1494 = vmatprep.subr.mxu0 %v890
    %1495 = vmatpush1.msra.mxu0 %v889
    %1496 = vmatprep.subr.mxu0 %v894
    %1497 = vmatpush1.msra.mxu0 %v893
    %1498 = vmatprep.subr.mxu0 %v898
    %1499 = vmatpush1.msra.mxu0 %v897
    %1500 = vmatprep.subr.mxu0 %v902
    %1501 = vmatpush1.msra.mxu0 %v901
    %1502 = vmatprep.subr.mxu0 %v906
    %1503 = vmatpush1.msra.mxu0 %v905
    %1504 = vmatprep.subr.mxu0 %v910
    %1505 = vmatpush1.msra.mxu0 %v909
    %1506 = vmatprep.subr.mxu0 %v914
    %1507 = vmatpush1.msra.mxu0 %v913
    %1508 = vmatprep.subr.mxu0 %v918
    %1509 = vmatpush1.msra.mxu0 %v917
    %1510 = vmatprep.mubr.f32.mxu0 %v1005
    %1511 = vmatmul.mubr.f32.gmra.mrb[0].mxu0 %v1004
    %v1512 = vpop.f32.mrb[0].mxu0
    %v1513 = vadd.f32 %v1442, %v1512
    %v1514 = vpop.f32.mrb[0].mxu0
    %v1515 = vadd.f32 %v1444, %v1514
    %1516 = vdwg.mxu0
    %1517 = vmatprep.subr.mxu0 %v28
    %1518 = vmatpush1.msra.mxu0 %v27
    %1519 = vmatprep.subr.mxu0 %v32
    %1520 = vmatpush1.msra.mxu0 %v31
    %1521 = vmatprep.subr.mxu0 %v36
    %1522 = vmatpush1.msra.mxu0 %v35
    %1523 = vmatprep.subr.mxu0 %v40
    %1524 = vmatpush1.msra.mxu0 %v39
    %1525 = vmatprep.subr.mxu0 %v44
    %1526 = vmatpush1.msra.mxu0 %v43
    %1527 = vmatprep.subr.mxu0 %v48
    %1528 = vmatpush1.msra.mxu0 %v47
    %1529 = vmatprep.subr.mxu0 %v52
    %1530 = vmatpush1.msra.mxu0 %v51
    %1531 = vmatprep.subr.mxu0 %v56
    %1532 = vmatpush1.msra.mxu0 %v55
    %1533 = vmatprep.subr.mxu0 %v60
    %1534 = vmatpush1.msra.mxu0 %v59
    %1535 = vmatprep.subr.mxu0 %v64
    %1536 = vmatpush1.msra.mxu0 %v63
    %1537 = vmatprep.subr.mxu0 %v68
    %1538 = vmatpush1.msra.mxu0 %v67
    %1539 = vmatprep.subr.mxu0 %v72
    %1540 = vmatpush1.msra.mxu0 %v71
    %1541 = vmatprep.subr.mxu0 %v76
    %1542 = vmatpush1.msra.mxu0 %v75
    %1543 = vmatprep.subr.mxu0 %v80
    %1544 = vmatpush1.msra.mxu0 %v79
    %1545 = vmatprep.subr.mxu0 %v84
    %1546 = vmatpush1.msra.mxu0 %v83
    %1547 = vmatprep.subr.mxu0 %v88
    %1548 = vmatpush1.msra.mxu0 %v87
    %1549 = vmatprep.subr.mxu0 %v92
    %1550 = vmatpush1.msra.mxu0 %v91
    %1551 = vmatprep.subr.mxu0 %v96
    %1552 = vmatpush1.msra.mxu0 %v95
    %1553 = vmatprep.subr.mxu0 %v100
    %1554 = vmatpush1.msra.mxu0 %v99
    %1555 = vmatprep.subr.mxu0 %v104
    %1556 = vmatpush1.msra.mxu0 %v103
    %1557 = vmatprep.subr.mxu0 %v108
    %1558 = vmatpush1.msra.mxu0 %v107
    %1559 = vmatprep.subr.mxu0 %v112
    %1560 = vmatpush1.msra.mxu0 %v111
    %1561 = vmatprep.subr.mxu0 %v116
    %1562 = vmatpush1.msra.mxu0 %v115
    %1563 = vmatprep.subr.mxu0 %v120
    %1564 = vmatpush1.msra.mxu0 %v119
    %1565 = vmatprep.subr.mxu0 %v124
    %1566 = vmatpush1.msra.mxu0 %v123
    %1567 = vmatprep.subr.mxu0 %v128
    %1568 = vmatpush1.msra.mxu0 %v127
    %1569 = vmatprep.subr.mxu0 %v132
    %1570 = vmatpush1.msra.mxu0 %v131
    %1571 = vmatprep.subr.mxu0 %v136
    %1572 = vmatpush1.msra.mxu0 %v135
    %1573 = vmatprep.subr.mxu0 %v140
    %1574 = vmatpush1.msra.mxu0 %v139
    %1575 = vmatprep.subr.mxu0 %v144
    %1576 = vmatpush1.msra.mxu0 %v143
    %1577 = vmatprep.subr.mxu0 %v148
    %1578 = vmatpush1.msra.mxu0 %v147
    %1579 = vmatprep.subr.mxu0 %v152
    %1580 = vmatpush1.msra.mxu0 %v151
    %1581 = vmatprep.mubr.f32.mxu0 %v962
    %1582 = vmatmul.mubr.f32.gmra.mrb[0].mxu0 %v954
    %v1583 = vpop.f32.mrb[0].mxu0
    %v1584 = vadd.f32 %v934, %v1583
    %v1585 = vpop.f32.mrb[0].mxu0
    %v1586 = vadd.f32 %v938, %v1585
    %1587 = vdwg.mxu0
    %1588 = vmatprep.subr.mxu0 %v156
    %1589 = vmatpush1.msra.mxu0 %v155
    %1590 = vmatprep.subr.mxu0 %v160
    %1591 = vmatpush1.msra.mxu0 %v159
    %1592 = vmatprep.subr.mxu0 %v164
    %1593 = vmatpush1.msra.mxu0 %v163
    %1594 = vmatprep.subr.mxu0 %v168
    %1595 = vmatpush1.msra.mxu0 %v167
    %1596 = vmatprep.subr.mxu0 %v172
    %1597 = vmatpush1.msra.mxu0 %v171
    %1598 = vmatprep.subr.mxu0 %v176
    %1599 = vmatpush1.msra.mxu0 %v175
    %1600 = vmatprep.subr.mxu0 %v180
    %1601 = vmatpush1.msra.mxu0 %v179
    %1602 = vmatprep.subr.mxu0 %v184
    %1603 = vmatpush1.msra.mxu0 %v183
    %1604 = vmatprep.subr.mxu0 %v188
    %1605 = vmatpush1.msra.mxu0 %v187
    %1606 = vmatprep.subr.mxu0 %v192
    %1607 = vmatpush1.msra.mxu0 %v191
    %1608 = vmatprep.subr.mxu0 %v196
    %1609 = vmatpush1.msra.mxu0 %v195
    %1610 = vmatprep.subr.mxu0 %v200
    %1611 = vmatpush1.msra.mxu0 %v199
    %1612 = vmatprep.subr.mxu0 %v204
    %1613 = vmatpush1.msra.mxu0 %v203
    %1614 = vmatprep.subr.mxu0 %v208
    %1615 = vmatpush1.msra.mxu0 %v207
    %1616 = vmatprep.subr.mxu0 %v212
    %1617 = vmatpush1.msra.mxu0 %v211
    %1618 = vmatprep.subr.mxu0 %v216
    %1619 = vmatpush1.msra.mxu0 %v215
    %1620 = vmatprep.subr.mxu0 %v220
    %1621 = vmatpush1.msra.mxu0 %v219
    %1622 = vmatprep.subr.mxu0 %v224
    %1623 = vmatpush1.msra.mxu0 %v223
    %1624 = vmatprep.subr.mxu0 %v228
    %1625 = vmatpush1.msra.mxu0 %v227
    %1626 = vmatprep.subr.mxu0 %v232
    %1627 = vmatpush1.msra.mxu0 %v231
    %1628 = vmatprep.subr.mxu0 %v236
    %1629 = vmatpush1.msra.mxu0 %v235
    %1630 = vmatprep.subr.mxu0 %v240
    %1631 = vmatpush1.msra.mxu0 %v239
    %1632 = vmatprep.subr.mxu0 %v244
    %1633 = vmatpush1.msra.mxu0 %v243
    %1634 = vmatprep.subr.mxu0 %v248
    %1635 = vmatpush1.msra.mxu0 %v247
    %1636 = vmatprep.subr.mxu0 %v252
    %1637 = vmatpush1.msra.mxu0 %v251
    %1638 = vmatprep.subr.mxu0 %v256
    %1639 = vmatpush1.msra.mxu0 %v255
    %1640 = vmatprep.subr.mxu0 %v260
    %1641 = vmatpush1.msra.mxu0 %v259
    %1642 = vmatprep.subr.mxu0 %v264
    %1643 = vmatpush1.msra.mxu0 %v263
    %1644 = vmatprep.subr.mxu0 %v268
    %1645 = vmatpush1.msra.mxu0 %v267
    %1646 = vmatprep.subr.mxu0 %v272
    %1647 = vmatpush1.msra.mxu0 %v271
    %1648 = vmatprep.subr.mxu0 %v276
    %1649 = vmatpush1.msra.mxu0 %v275
    %1650 = vmatprep.subr.mxu0 %v280
    %1651 = vmatpush1.msra.mxu0 %v279
    %1652 = vmatprep.mubr.f32.mxu0 %v963
    %1653 = vmatmul.mubr.f32.gmra.mrb[0].mxu0 %v961
    %v1654 = vpop.f32.mrb[0].mxu0
    %v1655 = vadd.f32 %v1584, %v1654
    %v1656 = vpop.f32.mrb[0].mxu0
    %v1657 = vadd.f32 %v1586, %v1656
    %1658 = vdwg.mxu0
    %1659 = vmatprep.subr.mxu0 %v284
    %1660 = vmatpush1.msra.mxu0 %v283
    %1661 = vmatprep.subr.mxu0 %v288
    %1662 = vmatpush1.msra.mxu0 %v287
    %1663 = vmatprep.subr.mxu0 %v292
    %1664 = vmatpush1.msra.mxu0 %v291
    %1665 = vmatprep.subr.mxu0 %v296
    %1666 = vmatpush1.msra.mxu0 %v295
    %1667 = vmatprep.subr.mxu0 %v300
    %1668 = vmatpush1.msra.mxu0 %v299
    %1669 = vmatprep.subr.mxu0 %v304
    %1670 = vmatpush1.msra.mxu0 %v303
    %1671 = vmatprep.subr.mxu0 %v308
    %1672 = vmatpush1.msra.mxu0 %v307
    %1673 = vmatprep.subr.mxu0 %v312
    %1674 = vmatpush1.msra.mxu0 %v311
    %1675 = vmatprep.subr.mxu0 %v316
    %1676 = vmatpush1.msra.mxu0 %v315
    %1677 = vmatprep.subr.mxu0 %v320
    %1678 = vmatpush1.msra.mxu0 %v319
    %1679 = vmatprep.subr.mxu0 %v324
    %1680 = vmatpush1.msra.mxu0 %v323
    %1681 = vmatprep.subr.mxu0 %v328
    %1682 = vmatpush1.msra.mxu0 %v327
    %1683 = vmatprep.subr.mxu0 %v332
    %1684 = vmatpush1.msra.mxu0 %v331
    %1685 = vmatprep.subr.mxu0 %v336
    %1686 = vmatpush1.msra.mxu0 %v335
    %1687 = vmatprep.subr.mxu0 %v340
    %1688 = vmatpush1.msra.mxu0 %v339
    %1689 = vmatprep.subr.mxu0 %v344
    %1690 = vmatpush1.msra.mxu0 %v343
    %1691 = vmatprep.subr.mxu0 %v348
    %1692 = vmatpush1.msra.mxu0 %v347
    %1693 = vmatprep.subr.mxu0 %v352
    %1694 = vmatpush1.msra.mxu0 %v351
    %1695 = vmatprep.subr.mxu0 %v356
    %1696 = vmatpush1.msra.mxu0 %v355
    %1697 = vmatprep.subr.mxu0 %v360
    %1698 = vmatpush1.msra.mxu0 %v359
    %1699 = vmatprep.subr.mxu0 %v364
    %1700 = vmatpush1.msra.mxu0 %v363
    %1701 = vmatprep.subr.mxu0 %v368
    %1702 = vmatpush1.msra.mxu0 %v367
    %1703 = vmatprep.subr.mxu0 %v372
    %1704 = vmatpush1.msra.mxu0 %v371
    %1705 = vmatprep.subr.mxu0 %v376
    %1706 = vmatpush1.msra.mxu0 %v375
    %1707 = vmatprep.subr.mxu0 %v380
    %1708 = vmatpush1.msra.mxu0 %v379
    %1709 = vmatprep.subr.mxu0 %v384
    %1710 = vmatpush1.msra.mxu0 %v383
    %1711 = vmatprep.subr.mxu0 %v388
    %1712 = vmatpush1.msra.mxu0 %v387
    %1713 = vmatprep.subr.mxu0 %v392
    %1714 = vmatpush1.msra.mxu0 %v391
    %1715 = vmatprep.subr.mxu0 %v396
    %1716 = vmatpush1.msra.mxu0 %v395
    %1717 = vmatprep.subr.mxu0 %v400
    %1718 = vmatpush1.msra.mxu0 %v399
    %1719 = vmatprep.subr.mxu0 %v404
    %1720 = vmatpush1.msra.mxu0 %v403
    %1721 = vmatprep.subr.mxu0 %v408
    %1722 = vmatpush1.msra.mxu0 %v407
    %1723 = vmatprep.mubr.f32.mxu0 %v979
    %1724 = vmatmul.mubr.f32.gmra.mrb[0].mxu0 %v971
    %v1725 = vpop.f32.mrb[0].mxu0
    %v1726 = vadd.f32 %v1655, %v1725
    %v1727 = vpop.f32.mrb[0].mxu0
    %v1728 = vadd.f32 %v1657, %v1727
    %1729 = vdwg.mxu0
    %1730 = vmatprep.subr.mxu0 %v412
    %1731 = vmatpush1.msra.mxu0 %v411
    %1732 = vmatprep.subr.mxu0 %v416
    %1733 = vmatpush1.msra.mxu0 %v415
    %1734 = vmatprep.subr.mxu0 %v420
    %1735 = vmatpush1.msra.mxu0 %v419
    %1736 = vmatprep.subr.mxu0 %v424
    %1737 = vmatpush1.msra.mxu0 %v423
    %1738 = vmatprep.subr.mxu0 %v428
    %1739 = vmatpush1.msra.mxu0 %v427
    %1740 = vmatprep.subr.mxu0 %v432
    %1741 = vmatpush1.msra.mxu0 %v431
    %1742 = vmatprep.subr.mxu0 %v436
    %1743 = vmatpush1.msra.mxu0 %v435
    %1744 = vmatprep.subr.mxu0 %v440
    %1745 = vmatpush1.msra.mxu0 %v439
    %1746 = vmatprep.subr.mxu0 %v444
    %1747 = vmatpush1.msra.mxu0 %v443
    %1748 = vmatprep.subr.mxu0 %v448
    %1749 = vmatpush1.msra.mxu0 %v447
    %1750 = vmatprep.subr.mxu0 %v452
    %1751 = vmatpush1.msra.mxu0 %v451
    %1752 = vmatprep.subr.mxu0 %v456
    %1753 = vmatpush1.msra.mxu0 %v455
    %1754 = vmatprep.subr.mxu0 %v460
    %1755 = vmatpush1.msra.mxu0 %v459
    %1756 = vmatprep.subr.mxu0 %v464
    %1757 = vmatpush1.msra.mxu0 %v463
    %1758 = vmatprep.subr.mxu0 %v468
    %1759 = vmatpush1.msra.mxu0 %v467
    %1760 = vmatprep.subr.mxu0 %v472
    %1761 = vmatpush1.msra.mxu0 %v471
    %1762 = vmatprep.subr.mxu0 %v476
    %1763 = vmatpush1.msra.mxu0 %v475
    %1764 = vmatprep.subr.mxu0 %v480
    %1765 = vmatpush1.msra.mxu0 %v479
    %1766 = vmatprep.subr.mxu0 %v484
    %1767 = vmatpush1.msra.mxu0 %v483
    %1768 = vmatprep.subr.mxu0 %v488
    %1769 = vmatpush1.msra.mxu0 %v487
    %1770 = vmatprep.subr.mxu0 %v492
    %1771 = vmatpush1.msra.mxu0 %v491
    %1772 = vmatprep.subr.mxu0 %v496
    %1773 = vmatpush1.msra.mxu0 %v495
    %1774 = vmatprep.subr.mxu0 %v500
    %1775 = vmatpush1.msra.mxu0 %v499
    %1776 = vmatprep.subr.mxu0 %v504
    %1777 = vmatpush1.msra.mxu0 %v503
    %1778 = vmatprep.subr.mxu0 %v508
    %1779 = vmatpush1.msra.mxu0 %v507
    %1780 = vmatprep.subr.mxu0 %v512
    %1781 = vmatpush1.msra.mxu0 %v511
    %1782 = vmatprep.subr.mxu0 %v516
    %1783 = vmatpush1.msra.mxu0 %v515
    %1784 = vmatprep.subr.mxu0 %v520
    %1785 = vmatpush1.msra.mxu0 %v519
    %1786 = vmatprep.subr.mxu0 %v524
    %1787 = vmatpush1.msra.mxu0 %v523
    %1788 = vmatprep.subr.mxu0 %v528
    %1789 = vmatpush1.msra.mxu0 %v527
    %1790 = vmatprep.subr.mxu0 %v532
    %1791 = vmatpush1.msra.mxu0 %v531
    %1792 = vmatprep.subr.mxu0 %v536
    %1793 = vmatpush1.msra.mxu0 %v535
    %1794 = vmatprep.mubr.f32.mxu0 %v980
    %1795 = vmatmul.mubr.f32.gmra.mrb[0].mxu0 %v978
    %v1796 = vpop.f32.mrb[0].mxu0
    %v1797 = vadd.f32 %v1726, %v1796
    %v1798 = vpop.f32.mrb[0].mxu0
    %v1799 = vadd.f32 %v1728, %v1798
    %1800 = vdwg.mxu0
    %1801 = vmatprep.subr.mxu0 %v540
    %1802 = vmatpush1.msra.mxu0 %v539
    %1803 = vmatprep.subr.mxu0 %v544
    %1804 = vmatpush1.msra.mxu0 %v543
    %1805 = vmatprep.subr.mxu0 %v548
    %1806 = vmatpush1.msra.mxu0 %v547
    %1807 = vmatprep.subr.mxu0 %v552
    %1808 = vmatpush1.msra.mxu0 %v551
    %1809 = vmatprep.subr.mxu0 %v556
    %1810 = vmatpush1.msra.mxu0 %v555
    %1811 = vmatprep.subr.mxu0 %v560
    %1812 = vmatpush1.msra.mxu0 %v559
    %1813 = vmatprep.subr.mxu0 %v564
    %1814 = vmatpush1.msra.mxu0 %v563
    %1815 = vmatprep.subr.mxu0 %v568
    %1816 = vmatpush1.msra.mxu0 %v567
    %1817 = vmatprep.subr.mxu0 %v572
    %1818 = vmatpush1.msra.mxu0 %v571
    %1819 = vmatprep.subr.mxu0 %v576
    %1820 = vmatpush1.msra.mxu0 %v575
    %1821 = vmatprep.subr.mxu0 %v580
    %1822 = vmatpush1.msra.mxu0 %v579
    %1823 = vmatprep.subr.mxu0 %v584
    %1824 = vmatpush1.msra.mxu0 %v583
    %1825 = vmatprep.subr.mxu0 %v588
    %1826 = vmatpush1.msra.mxu0 %v587
    %1827 = vmatprep.subr.mxu0 %v592
    %1828 = vmatpush1.msra.mxu0 %v591
    %1829 = vmatprep.subr.mxu0 %v596
    %1830 = vmatpush1.msra.mxu0 %v595
    %1831 = vmatprep.subr.mxu0 %v600
    %1832 = vmatpush1.msra.mxu0 %v599
    %1833 = vmatprep.subr.mxu0 %v604
    %1834 = vmatpush1.msra.mxu0 %v603
    %1835 = vmatprep.subr.mxu0 %v608
    %1836 = vmatpush1.msra.mxu0 %v607
    %1837 = vmatprep.subr.mxu0 %v612
    %1838 = vmatpush1.msra.mxu0 %v611
    %1839 = vmatprep.subr.mxu0 %v616
    %1840 = vmatpush1.msra.mxu0 %v615
    %1841 = vmatprep.subr.mxu0 %v620
    %1842 = vmatpush1.msra.mxu0 %v619
    %1843 = vmatprep.subr.mxu0 %v624
    %1844 = vmatpush1.msra.mxu0 %v623
    %1845 = vmatprep.subr.mxu0 %v628
    %1846 = vmatpush1.msra.mxu0 %v627
    %1847 = vmatprep.subr.mxu0 %v632
    %1848 = vmatpush1.msra.mxu0 %v631
    %1849 = vmatprep.subr.mxu0 %v636
    %1850 = vmatpush1.msra.mxu0 %v635
    %1851 = vmatprep.subr.mxu0 %v640
    %1852 = vmatpush1.msra.mxu0 %v639
    %1853 = vmatprep.subr.mxu0 %v644
    %1854 = vmatpush1.msra.mxu0 %v643
    %1855 = vmatprep.subr.mxu0 %v648
    %1856 = vmatpush1.msra.mxu0 %v647
    %1857 = vmatprep.subr.mxu0 %v652
    %1858 = vmatpush1.msra.mxu0 %v651
    %1859 = vmatprep.subr.mxu0 %v656
    %1860 = vmatpush1.msra.mxu0 %v655
    %1861 = vmatprep.subr.mxu0 %v660
    %1862 = vmatpush1.msra.mxu0 %v659
    %1863 = vmatprep.subr.mxu0 %v664
    %1864 = vmatpush1.msra.mxu0 %v663
    %1865 = vmatprep.mubr.f32.mxu0 %v996
    %1866 = vmatmul.mubr.f32.gmra.mrb[0].mxu0 %v988
    %v1867 = vpop.f32.mrb[0].mxu0
    %v1868 = vadd.f32 %v1797, %v1867
    %v1869 = vpop.f32.mrb[0].mxu0
    %v1870 = vadd.f32 %v1799, %v1869
    %1871 = vdwg.mxu0
    %1872 = vmatprep.subr.mxu0 %v668
    %1873 = vmatpush1.msra.mxu0 %v667
    %1874 = vmatprep.subr.mxu0 %v672
    %1875 = vmatpush1.msra.mxu0 %v671
    %1876 = vmatprep.subr.mxu0 %v676
    %1877 = vmatpush1.msra.mxu0 %v675
    %1878 = vmatprep.subr.mxu0 %v680
    %1879 = vmatpush1.msra.mxu0 %v679
    %1880 = vmatprep.subr.mxu0 %v684
    %1881 = vmatpush1.msra.mxu0 %v683
    %1882 = vmatprep.subr.mxu0 %v688
    %1883 = vmatpush1.msra.mxu0 %v687
    %1884 = vmatprep.subr.mxu0 %v692
    %1885 = vmatpush1.msra.mxu0 %v691
    %1886 = vmatprep.subr.mxu0 %v696
    %1887 = vmatpush1.msra.mxu0 %v695
    %1888 = vmatprep.subr.mxu0 %v700
    %1889 = vmatpush1.msra.mxu0 %v699
    %1890 = vmatprep.subr.mxu0 %v704
    %1891 = vmatpush1.msra.mxu0 %v703
    %1892 = vmatprep.subr.mxu0 %v708
    %1893 = vmatpush1.msra.mxu0 %v707
    %1894 = vmatprep.subr.mxu0 %v712
    %1895 = vmatpush1.msra.mxu0 %v711
    %1896 = vmatprep.subr.mxu0 %v716
    %1897 = vmatpush1.msra.mxu0 %v715
    %1898 = vmatprep.subr.mxu0 %v720
    %1899 = vmatpush1.msra.mxu0 %v719
    %1900 = vmatprep.subr.mxu0 %v724
    %1901 = vmatpush1.msra.mxu0 %v723
    %1902 = vmatprep.subr.mxu0 %v728
    %1903 = vmatpush1.msra.mxu0 %v727
    %1904 = vmatprep.subr.mxu0 %v732
    %1905 = vmatpush1.msra.mxu0 %v731
    %1906 = vmatprep.subr.mxu0 %v736
    %1907 = vmatpush1.msra.mxu0 %v735
    %1908 = vmatprep.subr.mxu0 %v740
    %1909 = vmatpush1.msra.mxu0 %v739
    %1910 = vmatprep.subr.mxu0 %v744
    %1911 = vmatpush1.msra.mxu0 %v743
    %1912 = vmatprep.subr.mxu0 %v748
    %1913 = vmatpush1.msra.mxu0 %v747
    %1914 = vmatprep.subr.mxu0 %v752
    %1915 = vmatpush1.msra.mxu0 %v751
    %1916 = vmatprep.subr.mxu0 %v756
    %1917 = vmatpush1.msra.mxu0 %v755
    %1918 = vmatprep.subr.mxu0 %v760
    %1919 = vmatpush1.msra.mxu0 %v759
    %1920 = vmatprep.subr.mxu0 %v764
    %1921 = vmatpush1.msra.mxu0 %v763
    %1922 = vmatprep.subr.mxu0 %v768
    %1923 = vmatpush1.msra.mxu0 %v767
    %1924 = vmatprep.subr.mxu0 %v772
    %1925 = vmatpush1.msra.mxu0 %v771
    %1926 = vmatprep.subr.mxu0 %v776
    %1927 = vmatpush1.msra.mxu0 %v775
    %1928 = vmatprep.subr.mxu0 %v780
    %1929 = vmatpush1.msra.mxu0 %v779
    %1930 = vmatprep.subr.mxu0 %v784
    %1931 = vmatpush1.msra.mxu0 %v783
    %1932 = vmatprep.subr.mxu0 %v788
    %1933 = vmatpush1.msra.mxu0 %v787
    %1934 = vmatprep.subr.mxu0 %v792
    %1935 = vmatpush1.msra.mxu0 %v791
    %1936 = vmatprep.mubr.f32.mxu0 %v997
    %1937 = vmatmul.mubr.f32.gmra.mrb[0].mxu0 %v995
    %v1938 = vpop.f32.mrb[0].mxu0
    %v1939 = vadd.f32 %v1868, %v1938
    %v1940 = vpop.f32.mrb[0].mxu0
    %v1941 = vadd.f32 %v1870, %v1940
    %1942 = vdwg.mxu0
    %1943 = vmatprep.subr.mxu0 %v796
    %1944 = vmatpush1.msra.mxu0 %v795
    %1945 = vmatprep.subr.mxu0 %v800
    %1946 = vmatpush1.msra.mxu0 %v799
    %1947 = vmatprep.subr.mxu0 %v804
    %1948 = vmatpush1.msra.mxu0 %v803
    %1949 = vmatprep.subr.mxu0 %v808
    %1950 = vmatpush1.msra.mxu0 %v807
    %1951 = vmatprep.subr.mxu0 %v812
    %1952 = vmatpush1.msra.mxu0 %v811
    %1953 = vmatprep.subr.mxu0 %v816
    %1954 = vmatpush1.msra.mxu0 %v815
    %1955 = vmatprep.subr.mxu0 %v820
    %1956 = vmatpush1.msra.mxu0 %v819
    %1957 = vmatprep.subr.mxu0 %v824
    %1958 = vmatpush1.msra.mxu0 %v823
    %1959 = vmatprep.subr.mxu0 %v828
    %1960 = vmatpush1.msra.mxu0 %v827
    %1961 = vmatprep.subr.mxu0 %v832
    %1962 = vmatpush1.msra.mxu0 %v831
    %1963 = vmatprep.subr.mxu0 %v836
    %1964 = vmatpush1.msra.mxu0 %v835
    %1965 = vmatprep.subr.mxu0 %v840
    %1966 = vmatpush1.msra.mxu0 %v839
    %1967 = vmatprep.subr.mxu0 %v844
    %1968 = vmatpush1.msra.mxu0 %v843
    %1969 = vmatprep.subr.mxu0 %v848
    %1970 = vmatpush1.msra.mxu0 %v847
    %1971 = vmatprep.subr.mxu0 %v852
    %1972 = vmatpush1.msra.mxu0 %v851
    %1973 = vmatprep.subr.mxu0 %v856
    %1974 = vmatpush1.msra.mxu0 %v855
    %1975 = vmatprep.subr.mxu0 %v860
    %1976 = vmatpush1.msra.mxu0 %v859
    %1977 = vmatprep.subr.mxu0 %v864
    %1978 = vmatpush1.msra.mxu0 %v863
    %1979 = vmatprep.subr.mxu0 %v868
    %1980 = vmatpush1.msra.mxu0 %v867
    %1981 = vmatprep.subr.mxu0 %v872
    %1982 = vmatpush1.msra.mxu0 %v871
    %1983 = vmatprep.subr.mxu0 %v876
    %1984 = vmatpush1.msra.mxu0 %v875
    %1985 = vmatprep.subr.mxu0 %v880
    %1986 = vmatpush1.msra.mxu0 %v879
    %1987 = vmatprep.subr.mxu0 %v884
    %1988 = vmatpush1.msra.mxu0 %v883
    %1989 = vmatprep.subr.mxu0 %v888
    %1990 = vmatpush1.msra.mxu0 %v887
    %1991 = vmatprep.subr.mxu0 %v892
    %1992 = vmatpush1.msra.mxu0 %v891
    %1993 = vmatprep.subr.mxu0 %v896
    %1994 = vmatpush1.msra.mxu0 %v895
    %1995 = vmatprep.subr.mxu0 %v900
    %1996 = vmatpush1.msra.mxu0 %v899
    %1997 = vmatprep.subr.mxu0 %v904
    %1998 = vmatpush1.msra.mxu0 %v903
    %1999 = vmatprep.subr.mxu0 %v908
    %2000 = vmatpush1.msra.mxu0 %v907
    %2001 = vmatprep.subr.mxu0 %v912
    %2002 = vmatpush1.msra.mxu0 %v911
    %2003 = vmatprep.subr.mxu0 %v916
    %2004 = vmatpush1.msra.mxu0 %v915
    %2005 = vmatprep.subr.mxu0 %v920
    %2006 = vmatpush1.msra.mxu0 %v919
    %2007 = vmatprep.mubr.f32.mxu0 %v1005
    %2008 = vmatmul.mubr.f32.gmra.mrb[0].mxu0 %v1004
    %v2009 = vpop.f32.mrb[0].mxu0
    %v2010 = vadd.f32 %v1939, %v2009
    %v2011 = vpop.f32.mrb[0].mxu0
    %v2012 = vadd.f32 %v1941, %v2011
    %2013 = vdwg.mxu0
    %v2014 = vmax.f32 %v1513, 0.0
    %v2015 = vmax.f32 %v1515, 0.0
    %v2016 = vmax.f32 %v2010, 0.0
    %v2017 = vmax.f32 %v2012, 0.0
    %v2018 = vld [vmem:[%s3] sm:$0xff]
    %v2019 = vld [vmem:[%s3 + $0x8] sm:$0xff]
    %v2020 = vld [vmem:[%s3 + $0x10] sm:$0xff]
    %v2021 = vld [vmem:[%s3 + $0x18] sm:$0xff]
    %v2022 = vld [vmem:[%s3 + $0x20] sm:$0xff]
    %v2023 = vld [vmem:[%s3 + $0x28] sm:$0xff]
    %v2024 = vld [vmem:[%s3 + $0x30] sm:$0xff]
    %v2025 = vld [vmem:[%s3 + $0x38] sm:$0xff]
    %v2026 = vld [vmem:[%s3 + $0x40] sm:$0xff]
    %v2027 = vld [vmem:[%s3 + $0x48] sm:$0xff]
    %v2028 = vld [vmem:[%s3 + $0x50] sm:$0xff]
    %v2029 = vld [vmem:[%s3 + $0x58] sm:$0xff]
    %v2030 = vld [vmem:[%s3 + $0x60] sm:$0xff]
    %v2031 = vld [vmem:[%s3 + $0x68] sm:$0xff]
    %v2032 = vld [vmem:[%s3 + $0x70] sm:$0xff]
    %v2033 = vld [vmem:[%s3 + $0x78] sm:$0xff]
    %v2034 = vld [vmem:[%s3 + $0x80] sm:$0xff]
    %v2035 = vld [vmem:[%s3 + $0x88] sm:$0xff]
    %v2036 = vld [vmem:[%s3 + $0x90] sm:$0xff]
    %v2037 = vld [vmem:[%s3 + $0x98] sm:$0xff]
    %v2038 = vld [vmem:[%s3 + $0xa0] sm:$0xff]
    %v2039 = vld [vmem:[%s3 + $0xa8] sm:$0xff]
    %v2040 = vld [vmem:[%s3 + $0xb0] sm:$0xff]
    %v2041 = vld [vmem:[%s3 + $0xb8] sm:$0xff]
    %v2042 = vld [vmem:[%s3 + $0xc0] sm:$0xff]
    %v2043 = vld [vmem:[%s3 + $0xc8] sm:$0xff]
    %v2044 = vld [vmem:[%s3 + $0xd0] sm:$0xff]
    %v2045 = vld [vmem:[%s3 + $0xd8] sm:$0xff]
    %v2046 = vld [vmem:[%s3 + $0xe0] sm:$0xff]
    %v2047 = vld [vmem:[%s3 + $0xe8] sm:$0xff]
    %v2048 = vld [vmem:[%s3 + $0xf0] sm:$0xff]
    %v2049 = vld [vmem:[%s3 + $0xf8] sm:$0xff]
    %v2050 = vld [vmem:[%s3 + $0x100] sm:$0xff]
    %v2051 = vld [vmem:[%s3 + $0x108] sm:$0xff]
    %v2052 = vld [vmem:[%s3 + $0x110] sm:$0xff]
    %v2053 = vld [vmem:[%s3 + $0x118] sm:$0xff]
    %v2054 = vld [vmem:[%s3 + $0x120] sm:$0xff]
    %v2055 = vld [vmem:[%s3 + $0x128] sm:$0xff]
    %v2056 = vld [vmem:[%s3 + $0x130] sm:$0xff]
    %v2057 = vld [vmem:[%s3 + $0x138] sm:$0xff]
    %v2058 = vld [vmem:[%s3 + $0x140] sm:$0xff]
    %v2059 = vld [vmem:[%s3 + $0x148] sm:$0xff]
    %v2060 = vld [vmem:[%s3 + $0x150] sm:$0xff]
    %v2061 = vld [vmem:[%s3 + $0x158] sm:$0xff]
    %v2062 = vld [vmem:[%s3 + $0x160] sm:$0xff]
    %v2063 = vld [vmem:[%s3 + $0x168] sm:$0xff]
    %v2064 = vld [vmem:[%s3 + $0x170] sm:$0xff]
    %v2065 = vld [vmem:[%s3 + $0x178] sm:$0xff]
    %v2066 = vld [vmem:[%s3 + $0x180] sm:$0xff]
    %v2067 = vld [vmem:[%s3 + $0x188] sm:$0xff]
    %v2068 = vld [vmem:[%s3 + $0x190] sm:$0xff]
    %v2069 = vld [vmem:[%s3 + $0x198] sm:$0xff]
    %v2070 = vld [vmem:[%s3 + $0x1a0] sm:$0xff]
    %v2071 = vld [vmem:[%s3 + $0x1a8] sm:$0xff]
    %v2072 = vld [vmem:[%s3 + $0x1b0] sm:$0xff]
    %v2073 = vld [vmem:[%s3 + $0x1b8] sm:$0xff]
    %v2074 = vld [vmem:[%s3 + $0x1c0] sm:$0xff]
    %v2075 = vld [vmem:[%s3 + $0x1c8] sm:$0xff]
    %v2076 = vld [vmem:[%s3 + $0x1d0] sm:$0xff]
    %v2077 = vld [vmem:[%s3 + $0x1d8] sm:$0xff]
    %v2078 = vld [vmem:[%s3 + $0x1e0] sm:$0xff]
    %v2079 = vld [vmem:[%s3 + $0x1e8] sm:$0xff]
    %v2080 = vld [vmem:[%s3 + $0x1f0] sm:$0xf]
    %v2081 = vld [vmem:[%s4] sm:$0x1]
    %v2083 = vlaneseq
    %v2084 = vshrl.u32 %v2083, 7
    %v2085 = vsub.s32 0, %v2084
    %v2086 = vrot.slane %v2081, %v2085
    %vm2088 = vcmask 949248
    %v2090 = vsel %vm2088, %v2017, 0
    %vm2092 = vcmask 1043456
    %v2094 = vsel %vm2092, %v2080, 0
    %2096 = vmatprep.subr.mxu0 0.0
    %2097 = vmatpush1.msra.mxu0 %v2018
    %2098 = vmatprep.subr.mxu0 0.0
    %2099 = vmatpush1.msra.mxu0 %v2019
    %2100 = vmatprep.subr.mxu0 0.0
    %2101 = vmatpush1.msra.mxu0 %v2020
    %2102 = vmatprep.subr.mxu0 0.0
    %2103 = vmatpush1.msra.mxu0 %v2021
    %2104 = vmatprep.subr.mxu0 0.0
    %2105 = vmatpush1.msra.mxu0 %v2022
    %2106 = vmatprep.subr.mxu0 0.0
    %2107 = vmatpush1.msra.mxu0 %v2023
    %2108 = vmatprep.subr.mxu0 0.0
    %2109 = vmatpush1.msra.mxu0 %v2024
    %2110 = vmatprep.subr.mxu0 0.0
    %2111 = vmatpush1.msra.mxu0 %v2025
    %2112 = vmatprep.subr.mxu0 0.0
    %2113 = vmatpush1.msra.mxu0 %v2026
    %2114 = vmatprep.subr.mxu0 0.0
    %2115 = vmatpush1.msra.mxu0 %v2027
    %2116 = vmatprep.subr.mxu0 0.0
    %2117 = vmatpush1.msra.mxu0 %v2028
    %2118 = vmatprep.subr.mxu0 0.0
    %2119 = vmatpush1.msra.mxu0 %v2029
    %2120 = vmatprep.subr.mxu0 0.0
    %2121 = vmatpush1.msra.mxu0 %v2030
    %2122 = vmatprep.subr.mxu0 0.0
    %2123 = vmatpush1.msra.mxu0 %v2031
    %2124 = vmatprep.subr.mxu0 0.0
    %2125 = vmatpush1.msra.mxu0 %v2032
    %2126 = vmatprep.subr.mxu0 0.0
    %2127 = vmatpush1.msra.mxu0 %v2033
    %2128 = vmatprep.subr.mxu0 0.0
    %2129 = vmatpush1.msra.mxu0 %v2034
    %2130 = vmatprep.subr.mxu0 0.0
    %2131 = vmatpush1.msra.mxu0 %v2035
    %2132 = vmatprep.subr.mxu0 0.0
    %2133 = vmatpush1.msra.mxu0 %v2036
    %2134 = vmatprep.subr.mxu0 0.0
    %2135 = vmatpush1.msra.mxu0 %v2037
    %2136 = vmatprep.subr.mxu0 0.0
    %2137 = vmatpush1.msra.mxu0 %v2038
    %2138 = vmatprep.subr.mxu0 0.0
    %2139 = vmatpush1.msra.mxu0 %v2039
    %2140 = vmatprep.subr.mxu0 0.0
    %2141 = vmatpush1.msra.mxu0 %v2040
    %2142 = vmatprep.subr.mxu0 0.0
    %2143 = vmatpush1.msra.mxu0 %v2041
    %2144 = vmatprep.subr.mxu0 0.0
    %2145 = vmatpush1.msra.mxu0 %v2042
    %2146 = vmatprep.subr.mxu0 0.0
    %2147 = vmatpush1.msra.mxu0 %v2043
    %2148 = vmatprep.subr.mxu0 0.0
    %2149 = vmatpush1.msra.mxu0 %v2044
    %2150 = vmatprep.subr.mxu0 0.0
    %2151 = vmatpush1.msra.mxu0 %v2045
    %2152 = vmatprep.subr.mxu0 0.0
    %2153 = vmatpush1.msra.mxu0 %v2046
    %2154 = vmatprep.subr.mxu0 0.0
    %2155 = vmatpush1.msra.mxu0 %v2047
    %2156 = vmatprep.subr.mxu0 0.0
    %2157 = vmatpush1.msra.mxu0 %v2048
    %2158 = vmatprep.subr.mxu0 0.0
    %2159 = vmatpush1.msra.mxu0 %v2049
    %2160 = vmatprep.mubr.f32.mxu0 %v2015
    %2161 = vmatmul.mubr.f32.gmra.mrb[0].mxu0 %v2014
    %v2162 = vpop.f32.mrb[0].mxu0
    %v2163 = vadd.f32 %v2086, %v2162
    %v2164 = vpop.f32.mrb[0].mxu0
    %2165 = vdwg.mxu0
    %2166 = vmatprep.subr.mxu0 0.0
    %2167 = vmatpush1.msra.mxu0 %v2050
    %2168 = vmatprep.subr.mxu0 0.0
    %2169 = vmatpush1.msra.mxu0 %v2051
    %2170 = vmatprep.subr.mxu0 0.0
    %2171 = vmatpush1.msra.mxu0 %v2052
    %2172 = vmatprep.subr.mxu0 0.0
    %2173 = vmatpush1.msra.mxu0 %v2053
    %2174 = vmatprep.subr.mxu0 0.0
    %2175 = vmatpush1.msra.mxu0 %v2054
    %2176 = vmatprep.subr.mxu0 0.0
    %2177 = vmatpush1.msra.mxu0 %v2055
    %2178 = vmatprep.subr.mxu0 0.0
    %2179 = vmatpush1.msra.mxu0 %v2056
    %2180 = vmatprep.subr.mxu0 0.0
    %2181 = vmatpush1.msra.mxu0 %v2057
    %2182 = vmatprep.subr.mxu0 0.0
    %2183 = vmatpush1.msra.mxu0 %v2058
    %2184 = vmatprep.subr.mxu0 0.0
    %2185 = vmatpush1.msra.mxu0 %v2059
    %2186 = vmatprep.subr.mxu0 0.0
    %2187 = vmatpush1.msra.mxu0 %v2060
    %2188 = vmatprep.subr.mxu0 0.0
    %2189 = vmatpush1.msra.mxu0 %v2061
    %2190 = vmatprep.subr.mxu0 0.0
    %2191 = vmatpush1.msra.mxu0 %v2062
    %2192 = vmatprep.subr.mxu0 0.0
    %2193 = vmatpush1.msra.mxu0 %v2063
    %2194 = vmatprep.subr.mxu0 0.0
    %2195 = vmatpush1.msra.mxu0 %v2064
    %2196 = vmatprep.subr.mxu0 0.0
    %2197 = vmatpush1.msra.mxu0 %v2065
    %2198 = vmatprep.subr.mxu0 0.0
    %2199 = vmatpush1.msra.mxu0 %v2066
    %2200 = vmatprep.subr.mxu0 0.0
    %2201 = vmatpush1.msra.mxu0 %v2067
    %2202 = vmatprep.subr.mxu0 0.0
    %2203 = vmatpush1.msra.mxu0 %v2068
    %2204 = vmatprep.subr.mxu0 0.0
    %2205 = vmatpush1.msra.mxu0 %v2069
    %2206 = vmatprep.subr.mxu0 0.0
    %2207 = vmatpush1.msra.mxu0 %v2070
    %2208 = vmatprep.subr.mxu0 0.0
    %2209 = vmatpush1.msra.mxu0 %v2071
    %2210 = vmatprep.subr.mxu0 0.0
    %2211 = vmatpush1.msra.mxu0 %v2072
    %2212 = vmatprep.subr.mxu0 0.0
    %2213 = vmatpush1.msra.mxu0 %v2073
    %2214 = vmatprep.subr.mxu0 0.0
    %2215 = vmatpush1.msra.mxu0 %v2074
    %2216 = vmatprep.subr.mxu0 0.0
    %2217 = vmatpush1.msra.mxu0 %v2075
    %2218 = vmatprep.subr.mxu0 0.0
    %2219 = vmatpush1.msra.mxu0 %v2076
    %2220 = vmatprep.subr.mxu0 0.0
    %2221 = vmatpush1.msra.mxu0 %v2077
    %2222 = vmatprep.subr.mxu0 0.0
    %2223 = vmatpush1.msra.mxu0 %v2078
    %2224 = vmatprep.subr.mxu0 0.0
    %2225 = vmatpush1.msra.mxu0 %v2079
    %2226 = vmatprep.subr.mxu0 0.0
    %2227 = vmatpush1.msra.mxu0 %v2094
    %2228 = vmatprep.subr.mxu0 0.0
    %2229 = vmatpush1.msra.mxu0 0.0
    %2230 = vmatprep.mubr.f32.mxu0 %v2090
    %2231 = vmatmul.mubr.f32.gmra.mrb[0].mxu0 %v2016
    %v2232 = vpop.f32.mrb[0].mxu0
    %v2233 = vadd.f32 %v2163, %v2232
    %v2234 = vpop.f32.mrb[0].mxu0
    %2235 = vdwg.mxu0
    %vm2236 = vcmask 74752
    %v2237 = vsel %vm2236, %v2233, -inf
    %2238 = vmax.xlane.f32.xlu0 %v2237
    %v2239 = vpop.xlane.xlu0 %2238
    %v2240 = vsub.f32 %v2233, %v2239
    %v2241 = vmul.f32 %v2240, 1.442695
    %v2242 = vpow.pop %v2241
    %v2243 = vsel %vm2236, %v2242, 0.0
    %2244 = vadd.xlane.f32.xlu0 %v2243
    %v2245 = vpop.xlane.xlu0 %2244
    %v2246 = vlog2.pop %v2245
    %v2247 = vmul.f32 %v2246, 0.6931472
    %v2248 = vsub.f32 %v2240, %v2247
    %2249 = vst.msk [vmem:[#allocation2] sm:$0x3] %vm2236, %v2248
    // Predicated region
    $region22: #{cnn_forward.3} parent=1 // pred_check
      _
    $region23: #{cnn_forward.3} parent=1 // pred_check_branch
      %2251 = sbr.rel (0) target = $region25
    $region24: #{cnn_forward.3} parent=1 // pred_region
      %s2253 = ssub.s32 32, 32
      %2254 = vsyncadd [#allocation3], %s2253
      %s2256 = sshll.u32 [#allocation2], 4
      %s2257 = int_to_ptr.vmem [resolvable:$true] %s2256
      %2259 = dma.vmem_to_hbm [thread:$0]  %s2257, 32, %s5, [#allocation3]
    $region25: #{cnn_forward.3} parent=1 // pred_fallthru
      _
    // Predicated region
    $region26: #{cnn_forward.3} parent=1 // pred_check
      _
    $region27: #{cnn_forward.3} parent=1 // pred_check_branch
      %2261 = sbr.rel (0) target = $region29
    $region28: #{cnn_forward.3} parent=1 // pred_region
      %2262 = dma.done [#allocation3], 32
    $region29: #{cnn_forward.3} parent=1 // pred_fallthru
      _
    %2263 = vsyncpa [#allocation3], 1

</llo_original>
